<compile_context>
chip_gen: v5e
topology: v5e:2x2
jax: 0.10.0
libtpu: 0.0.40
codegen_flags: <defaults>
</compile_context>

<pallas_src>
import jax
import jax.numpy as jnp
import numpy as np
from jax import lax
from jax.experimental import pallas as pl
from jax.experimental.pallas import tpu as pltpu


def _round_up(v, m):
    return (v + m - 1) // m * m


# --------------------------- fused NIN-block kernel -------------------------- #

def _nin_block_kernel(x_ref, w1_ref, b1_ref, w2_ref, b2_ref, w3_ref, b3_ref, o_ref):
    # x:(tm,K) bf16  w1:(K,C) bf16  w2,w3:(C,C) bf16  b*:(1,C) f32  o:(tm,C) bf16
    h = jnp.dot(x_ref[...], w1_ref[...], preferred_element_type=jnp.float32)
    h = jnp.maximum(h + b1_ref[...], 0.0)
    h = jnp.dot(h.astype(w2_ref.dtype), w2_ref[...], preferred_element_type=jnp.float32)
    h = jnp.maximum(h + b2_ref[...], 0.0)
    h = jnp.dot(h.astype(w3_ref.dtype), w3_ref[...], preferred_element_type=jnp.float32)
    h = jnp.maximum(h + b3_ref[...], 0.0)
    o_ref[...] = h.astype(o_ref.dtype)


def nin_block_matmul(x, w1, b1, w2, b2, w3, b3):
    """Fused relu(relu(relu(x@w1+b1)@w2+b2)@w3+b3).  x:(M,K) bf16 -> (M,Cp) bf16."""
    M, K = x.shape
    Cp = w1.shape[1]

    # Size the row tile to the problem: single grid step for small M,
    # 256-row tiles (v6e/v7x MXU-friendly, megacore-parallel) for large M.
    tm = _round_up(M, 8)
    if tm > 512:
        tm = 256
    Mp = _round_up(M, tm)
    if Mp != M:
        x = jnp.pad(x, ((0, Mp - M), (0, 0)))

    out = pl.pallas_call(
        _nin_block_kernel,
        out_shape=jax.ShapeDtypeStruct((Mp, Cp), jnp.bfloat16),
        grid=(Mp // tm,),
        in_specs=[
            pl.BlockSpec((tm, K), lambda i: (i, 0)),
            pl.BlockSpec((K, Cp), lambda i: (0, 0)),
            pl.BlockSpec((1, Cp), lambda i: (0, 0)),
            pl.BlockSpec((Cp, Cp), lambda i: (0, 0)),
            pl.BlockSpec((1, Cp), lambda i: (0, 0)),
            pl.BlockSpec((Cp, Cp), lambda i: (0, 0)),
            pl.BlockSpec((1, Cp), lambda i: (0, 0)),
        ],
        out_specs=pl.BlockSpec((tm, Cp), lambda i: (i, 0)),
        compiler_params=pltpu.CompilerParams(
            dimension_semantics=("parallel",),
            vmem_limit_bytes=32 * 1024 * 1024,  # safe on v7x's 64 MiB/TC
        ),
    )(x, w1, b1, w2, b2, w3, b3)
    return out[:M]


# ------------------------------ conv via im2col ------------------------------ #

def _im2col(x_nhwc, kh, kw, stride, padding):
    # TODO(synk): patch extraction could be folded into the Pallas kernel
    # (DMA the NHWC tile and build patches in VMEM with pl.ds); kept in JAX
    # since at these shapes it is a few-hundred-KB bf16 op.
    N, H, W, C = x_nhwc.shape
    xpad = jnp.pad(x_nhwc, ((0, 0), (padding, padding), (padding, padding), (0, 0)))
    Hp, Wp = H + 2 * padding, W + 2 * padding
    Ho = (Hp - kh) // stride + 1
    Wo = (Wp - kw) // stride + 1
    cols = []
    for di in range(kh):
        for dj in range(kw):
            cols.append(
                xpad[:, di:di + stride * (Ho - 1) + 1:stride,
                        dj:dj + stride * (Wo - 1) + 1:stride, :]
            )
    patches = jnp.stack(cols, axis=3)               # (N, Ho, Wo, kh*kw, C)
    return patches.reshape(N * Ho * Wo, kh * kw * C), Ho, Wo


# ------------------------------- the network --------------------------------- #

# (Cin, Cout, k, stride, pad) for the 4 NIN blocks of the original module.
BLOCK_CFGS = [
    (1, 96, 11, 4, 0),
    (96, 255, 5, 1, 2),
    (255, 384, 3, 1, 1),
    (384, 10, 3, 1, 1),
]


def _cin_pad(cin):
    return cin if cin == 1 else _round_up(cin, 128)


def init_params(key):
    """PyTorch-layout parameters: per block [(w_kxk, b), (w_1x1, b), (w_1x1, b)]."""
    params = []
    for cin, cout, k, _, _ in BLOCK_CFGS:
        block = []
        for (ci, co, kk) in [(cin, cout, k), (cout, cout, 1), (cout, cout, 1)]:
            key, kw_, kb_ = jax.random.split(key, 3)
            fan_in = ci * kk * kk
            w = jax.random.normal(kw_, (co, ci, kk, kk), jnp.float32) * np.sqrt(2.0 / fan_in)
            b = jax.random.normal(kb_, (co,), jnp.float32) * 0.01
            block.append((w, b))
        params.append(block)
    return params


def prepare_params(raw_params):
    """One-time weight prep: matmul layout, 128-lane channel padding, bf16 cast."""
    prepped = []
    for (cin, cout, k, _, _), ((w1, b1), (w2, b2), (w3, b3)) in zip(BLOCK_CFGS, raw_params):
        cin_p = _cin_pad(cin)
        cout_p = _round_up(cout, 128)

        # Spatial conv: (Cout, Cin, k, k) -> (k*k*Cin_p, Cout_p), feature order (di, dj, cin).
        w1p = jnp.pad(w1, ((0, cout_p - cout), (0, cin_p - cin), (0, 0), (0, 0)))
        w1m = jnp.transpose(w1p, (2, 3, 1, 0)).reshape(k * k * cin_p, cout_p)

        # 1x1 convs: (Cout, Cout, 1, 1) -> (Cin_p, Cout_p) matmul layout.
        def _one_by_one(w):
            wp = jnp.pad(w[:, :, 0, 0], ((0, cout_p - cout), (0, cout_p - cout)))
            return jnp.transpose(wp, (1, 0))

        def _bias(b):
            return jnp.pad(b, (0, cout_p - cout)).reshape(1, cout_p).astype(jnp.float32)

        prepped.append((
            w1m.astype(jnp.bfloat16), _bias(b1),
            _one_by_one(w2).astype(jnp.bfloat16), _bias(b2),
            _one_by_one(w3).astype(jnp.bfloat16), _bias(b3),
        ))
    return prepped


@jax.jit
def net_forward(x_nchw, prepped_params):
    x = jnp.transpose(x_nchw, (0, 2, 3, 1)).astype(jnp.bfloat16)   # NHWC bf16
    for bi, ((_, _, k, s, p), block) in enumerate(zip(BLOCK_CFGS, prepped_params)):
        w1, b1, w2, b2, w3, b3 = block
        N = x.shape[0]
        patches, Ho, Wo = _im2col(x, k, k, s, p)
        y = nin_block_matmul(patches, w1, b1, w2, b2, w3, b3)       # fused Pallas block
        x = y.reshape(N, Ho, Wo, -1)
        if bi < 3:
            # TODO(synk): MaxPool2d(3, stride=2) kept as JAX reduce_window glue;
            # negligible vs the Pallas block matmuls.
            x = lax.reduce_window(x, jnp.array(-jnp.inf, x.dtype), lax.max,
                                  (1, 3, 3, 1), (1, 2, 2, 1), "VALID")
        # nn.Dropout(0.5) sits before the last NIN block; identity at inference.
    # AdaptiveAvgPool2d((1,1)) + Flatten; padded channels are exactly zero.
    out = jnp.mean(x.astype(jnp.float32), axis=(1, 2))
    return out[:, :10]


# --------------------------- pure-JAX reference ------------------------------ #
# Matches the kernel's numerics (bf16 MXU operands, f32 accumulation, bf16
# activations between layers) so the comparison tests structure, not dtype.

@jax.jit
def ref_forward(x_nchw, raw_params):
    x = x_nchw.astype(jnp.bfloat16)
    for bi, ((_, _, k, s, p), block) in enumerate(zip(BLOCK_CFGS, raw_params)):
        conv_cfgs = [(k, s, p), (1, 1, 0), (1, 1, 0)]
        for (kk, ss, pp), (w, b) in zip(conv_cfgs, block):
            y = lax.conv_general_dilated(
                x.astype(jnp.bfloat16), w.astype(jnp.bfloat16),
                (ss, ss), [(pp, pp), (pp, pp)],
                dimension_numbers=("NCHW", "OIHW", "NCHW"),
                preferred_element_type=jnp.float32)
            y = jnp.maximum(y + b[None, :, None, None], 0.0)
            x = y.astype(jnp.bfloat16)
        if bi < 3:
            x = lax.reduce_window(x, jnp.array(-jnp.inf, x.dtype), lax.max,
                                  (1, 1, 3, 3), (1, 1, 2, 2), "VALID")
    return jnp.mean(x.astype(jnp.float32), axis=(2, 3))


# ----------------------------------- main ------------------------------------ #

if __name__ == "__main__":
    key = jax.random.PRNGKey(0)
    pkey, xkey = jax.random.split(key)
    raw_params = init_params(pkey)
    prepped = prepare_params(raw_params)            # one-time, outside the jitted forward

    # 67 is the smallest spatial size that survives conv(11,s4) + three 3/2 max-pools.
    x = jax.random.normal(xkey, (2, 1, 67, 67), jnp.float32)

    out = jax.block_until_ready(net_forward(x, prepped))
    assert out.shape == (2, 10), out.shape

    ref = jax.block_until_ready(ref_forward(x, raw_params))
    np.testing.assert_allclose(np.asarray(out), np.asarray(ref), rtol=2e-2, atol=2e-2)

    print("KERNEL_OK")
</pallas_src>

<mosaic_0001>
module attributes {stable_mosaic.version = 11 : i64} {
  func.func @_nin_block_kernel(%arg0: i32, %arg1: memref<456x121xbf16, #tpu.memory_space<vmem>>, %arg2: memref<121x128xbf16, #tpu.memory_space<vmem>>, %arg3: memref<1x128xf32, #tpu.memory_space<vmem>>, %arg4: memref<128x128xbf16, #tpu.memory_space<vmem>>, %arg5: memref<1x128xf32, #tpu.memory_space<vmem>>, %arg6: memref<128x128xbf16, #tpu.memory_space<vmem>>, %arg7: memref<1x128xf32, #tpu.memory_space<vmem>>, %arg8: memref<456x128xbf16, #tpu.memory_space<vmem>>) attributes {dimension_semantics = [#tpu.dimension_semantics<parallel>], iteration_bounds = array<i64: 1>, scalar_prefetch = 0 : i64, scratch_operands = 0 : i64, tpu.core_type = #tpu.core_type<tc>, window_params = [{transform_indices = @transform_0, window_bounds = array<i64: 456, 121>}, {pipeline_mode = #tpu.pipeline_mode<synchronous>, transform_indices = @transform_1, window_bounds = array<i64: 121, 128>}, {pipeline_mode = #tpu.pipeline_mode<synchronous>, transform_indices = @transform_2, window_bounds = array<i64: 1, 128>}, {pipeline_mode = #tpu.pipeline_mode<synchronous>, transform_indices = @transform_3, window_bounds = array<i64: 128, 128>}, {pipeline_mode = #tpu.pipeline_mode<synchronous>, transform_indices = @transform_4, window_bounds = array<i64: 1, 128>}, {pipeline_mode = #tpu.pipeline_mode<synchronous>, transform_indices = @transform_5, window_bounds = array<i64: 128, 128>}, {pipeline_mode = #tpu.pipeline_mode<synchronous>, transform_indices = @transform_6, window_bounds = array<i64: 1, 128>}, {transform_indices = @transform_7, window_bounds = array<i64: 456, 128>}]} {
    %c0 = arith.constant 0 : index
    %c0_0 = arith.constant 0 : index
    %0 = vector.load %arg1[%c0, %c0_0] : memref<456x121xbf16, #tpu.memory_space<vmem>>, vector<456x121xbf16>
    %c0_1 = arith.constant 0 : index
    %c0_2 = arith.constant 0 : index
    %1 = vector.load %arg2[%c0_1, %c0_2] : memref<121x128xbf16, #tpu.memory_space<vmem>>, vector<121x128xbf16>
    %cst = arith.constant dense<0.000000e+00> : vector<456x128xf32>
    %2 = tpu.matmul %0, %1, %cst {dimension_numbers = #tpu.dot_dimension_numbers<[1], [0], [0], [1], [0, 0, 1, 1], [], []>} : vector<456x121xbf16>, vector<121x128xbf16>, vector<456x128xf32> -> vector<456x128xf32>
    %c0_3 = arith.constant 0 : index
    %c0_4 = arith.constant 0 : index
    %3 = vector.load %arg3[%c0_3, %c0_4] : memref<1x128xf32, #tpu.memory_space<vmem>>, vector<1x128xf32>
    %4 = vector.broadcast %3 : vector<1x128xf32> to vector<456x128xf32>
    %5 = arith.addf %2, %4 : vector<456x128xf32>
    %cst_5 = arith.constant 0.000000e+00 : f32
    %6 = vector.broadcast %cst_5 : f32 to vector<456x128xf32>
    %7 = arith.maximumf %5, %6 : vector<456x128xf32>
    %8 = arith.truncf %7 : vector<456x128xf32> to vector<456x128xbf16>
    %c0_6 = arith.constant 0 : index
    %c0_7 = arith.constant 0 : index
    %9 = vector.load %arg4[%c0_6, %c0_7] : memref<128x128xbf16, #tpu.memory_space<vmem>>, vector<128x128xbf16>
    %cst_8 = arith.constant dense<0.000000e+00> : vector<456x128xf32>
    %10 = tpu.matmul %8, %9, %cst_8 {dimension_numbers = #tpu.dot_dimension_numbers<[1], [0], [0], [1], [0, 0, 1, 1], [], []>} : vector<456x128xbf16>, vector<128x128xbf16>, vector<456x128xf32> -> vector<456x128xf32>
    %c0_9 = arith.constant 0 : index
    %c0_10 = arith.constant 0 : index
    %11 = vector.load %arg5[%c0_9, %c0_10] : memref<1x128xf32, #tpu.memory_space<vmem>>, vector<1x128xf32>
    %12 = vector.broadcast %11 : vector<1x128xf32> to vector<456x128xf32>
    %13 = arith.addf %10, %12 : vector<456x128xf32>
    %cst_11 = arith.constant 0.000000e+00 : f32
    %14 = vector.broadcast %cst_11 : f32 to vector<456x128xf32>
    %15 = arith.maximumf %13, %14 : vector<456x128xf32>
    %16 = arith.truncf %15 : vector<456x128xf32> to vector<456x128xbf16>
    %c0_12 = arith.constant 0 : index
    %c0_13 = arith.constant 0 : index
    %17 = vector.load %arg6[%c0_12, %c0_13] : memref<128x128xbf16, #tpu.memory_space<vmem>>, vector<128x128xbf16>
    %cst_14 = arith.constant dense<0.000000e+00> : vector<456x128xf32>
    %18 = tpu.matmul %16, %17, %cst_14 {dimension_numbers = #tpu.dot_dimension_numbers<[1], [0], [0], [1], [0, 0, 1, 1], [], []>} : vector<456x128xbf16>, vector<128x128xbf16>, vector<456x128xf32> -> vector<456x128xf32>
    %c0_15 = arith.constant 0 : index
    %c0_16 = arith.constant 0 : index
    %19 = vector.load %arg7[%c0_15, %c0_16] : memref<1x128xf32, #tpu.memory_space<vmem>>, vector<1x128xf32>
    %20 = vector.broadcast %19 : vector<1x128xf32> to vector<456x128xf32>
    %21 = arith.addf %18, %20 : vector<456x128xf32>
    %cst_17 = arith.constant 0.000000e+00 : f32
    %22 = vector.broadcast %cst_17 : f32 to vector<456x128xf32>
    %23 = arith.maximumf %21, %22 : vector<456x128xf32>
    %24 = arith.truncf %23 : vector<456x128xf32> to vector<456x128xbf16>
    %c0_18 = arith.constant 0 : index
    %c0_19 = arith.constant 0 : index
    %25 = vector.load %arg8[%c0_18, %c0_19] : memref<456x128xbf16, #tpu.memory_space<vmem>>, vector<456x128xbf16>
    tpu.vector_store %arg8[%c0_18, %c0_19], %24 {strides = array<i32>} : memref<456x128xbf16, #tpu.memory_space<vmem>>, vector<456x128xbf16>,
    return
  }
  func.func @transform_0(%arg0: i32) -> (i32, i32) {
    %c0_i32 = arith.constant 0 : i32
    %c0_i32_0 = arith.constant 0 : i32
    return %arg0, %c0_i32 : i32, i32
  }
  func.func @transform_1(%arg0: i32) -> (i32, i32) {
    %c0_i32 = arith.constant 0 : i32
    %c0_i32_0 = arith.constant 0 : i32
    %c0_i32_1 = arith.constant 0 : i32
    return %c0_i32, %c0_i32_0 : i32, i32
  }
  func.func @transform_2(%arg0: i32) -> (i32, i32) {
    %c0_i32 = arith.constant 0 : i32
    %c0_i32_0 = arith.constant 0 : i32
    %c0_i32_1 = arith.constant 0 : i32
    return %c0_i32, %c0_i32_0 : i32, i32
  }
  func.func @transform_3(%arg0: i32) -> (i32, i32) {
    %c0_i32 = arith.constant 0 : i32
    %c0_i32_0 = arith.constant 0 : i32
    %c0_i32_1 = arith.constant 0 : i32
    return %c0_i32, %c0_i32_0 : i32, i32
  }
  func.func @transform_4(%arg0: i32) -> (i32, i32) {
    %c0_i32 = arith.constant 0 : i32
    %c0_i32_0 = arith.constant 0 : i32
    %c0_i32_1 = arith.constant 0 : i32
    return %c0_i32, %c0_i32_0 : i32, i32
  }
  func.func @transform_5(%arg0: i32) -> (i32, i32) {
    %c0_i32 = arith.constant 0 : i32
    %c0_i32_0 = arith.constant 0 : i32
    %c0_i32_1 = arith.constant 0 : i32
    return %c0_i32, %c0_i32_0 : i32, i32
  }
  func.func @transform_6(%arg0: i32) -> (i32, i32) {
    %c0_i32 = arith.constant 0 : i32
    %c0_i32_0 = arith.constant 0 : i32
    %c0_i32_1 = arith.constant 0 : i32
    return %c0_i32, %c0_i32_0 : i32, i32
  }
  func.func @transform_7(%arg0: i32) -> (i32, i32) {
    %c0_i32 = arith.constant 0 : i32
    %c0_i32_0 = arith.constant 0 : i32
    return %arg0, %c0_i32 : i32, i32
  }
}

module attributes {stable_mosaic.version = 11 : i64} {
  func.func @_nin_block_kernel(%arg0: i32, %arg1: memref<104x3200xbf16, #tpu.memory_space<vmem>>, %arg2: memref<3200x256xbf16, #tpu.memory_space<vmem>>, %arg3: memref<1x256xf32, #tpu.memory_space<vmem>>, %arg4: memref<256x256xbf16, #tpu.memory_space<vmem>>, %arg5: memref<1x256xf32, #tpu.memory_space<vmem>>, %arg6: memref<256x256xbf16, #tpu.memory_space<vmem>>, %arg7: memref<1x256xf32, #tpu.memory_space<vmem>>, %arg8: memref<104x256xbf16, #tpu.memory_space<vmem>>) attributes {dimension_semantics = [#tpu.dimension_semantics<parallel>], iteration_bounds = array<i64: 1>, scalar_prefetch = 0 : i64, scratch_operands = 0 : i64, tpu.core_type = #tpu.core_type<tc>, window_params = [{transform_indices = @transform_0, window_bounds = array<i64: 104, 3200>}, {pipeline_mode = #tpu.pipeline_mode<synchronous>, transform_indices = @transform_1, window_bounds = array<i64: 3200, 256>}, {pipeline_mode = #tpu.pipeline_mode<synchronous>, transform_indices = @transform_2, window_bounds = array<i64: 1, 256>}, {pipeline_mode = #tpu.pipeline_mode<synchronous>, transform_indices = @transform_3, window_bounds = array<i64: 256, 256>}, {pipeline_mode = #tpu.pipeline_mode<synchronous>, transform_indices = @transform_4, window_bounds = array<i64: 1, 256>}, {pipeline_mode = #tpu.pipeline_mode<synchronous>, transform_indices = @transform_5, window_bounds = array<i64: 256, 256>}, {pipeline_mode = #tpu.pipeline_mode<synchronous>, transform_indices = @transform_6, window_bounds = array<i64: 1, 256>}, {transform_indices = @transform_7, window_bounds = array<i64: 104, 256>}]} {
    %c0 = arith.constant 0 : index
    %c0_0 = arith.constant 0 : index
    %0 = vector.load %arg1[%c0, %c0_0] : memref<104x3200xbf16, #tpu.memory_space<vmem>>, vector<104x3200xbf16>
    %c0_1 = arith.constant 0 : index
    %c0_2 = arith.constant 0 : index
    %1 = vector.load %arg2[%c0_1, %c0_2] : memref<3200x256xbf16, #tpu.memory_space<vmem>>, vector<3200x256xbf16>
    %cst = arith.constant dense<0.000000e+00> : vector<104x256xf32>
    %2 = tpu.matmul %0, %1, %cst {dimension_numbers = #tpu.dot_dimension_numbers<[1], [0], [0], [1], [0, 0, 1, 1], [], []>} : vector<104x3200xbf16>, vector<3200x256xbf16>, vector<104x256xf32> -> vector<104x256xf32>
    %c0_3 = arith.constant 0 : index
    %c0_4 = arith.constant 0 : index
    %3 = vector.load %arg3[%c0_3, %c0_4] : memref<1x256xf32, #tpu.memory_space<vmem>>, vector<1x256xf32>
    %4 = vector.broadcast %3 : vector<1x256xf32> to vector<104x256xf32>
    %5 = arith.addf %2, %4 : vector<104x256xf32>
    %cst_5 = arith.constant 0.000000e+00 : f32
    %6 = vector.broadcast %cst_5 : f32 to vector<104x256xf32>
    %7 = arith.maximumf %5, %6 : vector<104x256xf32>
    %8 = arith.truncf %7 : vector<104x256xf32> to vector<104x256xbf16>
    %c0_6 = arith.constant 0 : index
    %c0_7 = arith.constant 0 : index
    %9 = vector.load %arg4[%c0_6, %c0_7] : memref<256x256xbf16, #tpu.memory_space<vmem>>, vector<256x256xbf16>
    %cst_8 = arith.constant dense<0.000000e+00> : vector<104x256xf32>
    %10 = tpu.matmul %8, %9, %cst_8 {dimension_numbers = #tpu.dot_dimension_numbers<[1], [0], [0], [1], [0, 0, 1, 1], [], []>} : vector<104x256xbf16>, vector<256x256xbf16>, vector<104x256xf32> -> vector<104x256xf32>
    %c0_9 = arith.constant 0 : index
    %c0_10 = arith.constant 0 : index
    %11 = vector.load %arg5[%c0_9, %c0_10] : memref<1x256xf32, #tpu.memory_space<vmem>>, vector<1x256xf32>
    %12 = vector.broadcast %11 : vector<1x256xf32> to vector<104x256xf32>
    %13 = arith.addf %10, %12 : vector<104x256xf32>
    %cst_11 = arith.constant 0.000000e+00 : f32
    %14 = vector.broadcast %cst_11 : f32 to vector<104x256xf32>
    %15 = arith.maximumf %13, %14 : vector<104x256xf32>
    %16 = arith.truncf %15 : vector<104x256xf32> to vector<104x256xbf16>
    %c0_12 = arith.constant 0 : index
    %c0_13 = arith.constant 0 : index
    %17 = vector.load %arg6[%c0_12, %c0_13] : memref<256x256xbf16, #tpu.memory_space<vmem>>, vector<256x256xbf16>
    %cst_14 = arith.constant dense<0.000000e+00> : vector<104x256xf32>
    %18 = tpu.matmul %16, %17, %cst_14 {dimension_numbers = #tpu.dot_dimension_numbers<[1], [0], [0], [1], [0, 0, 1, 1], [], []>} : vector<104x256xbf16>, vector<256x256xbf16>, vector<104x256xf32> -> vector<104x256xf32>
    %c0_15 = arith.constant 0 : index
    %c0_16 = arith.constant 0 : index
    %19 = vector.load %arg7[%c0_15, %c0_16] : memref<1x256xf32, #tpu.memory_space<vmem>>, vector<1x256xf32>
    %20 = vector.broadcast %19 : vector<1x256xf32> to vector<104x256xf32>
    %21 = arith.addf %18, %20 : vector<104x256xf32>
    %cst_17 = arith.constant 0.000000e+00 : f32
    %22 = vector.broadcast %cst_17 : f32 to vector<104x256xf32>
    %23 = arith.maximumf %21, %22 : vector<104x256xf32>
    %24 = arith.truncf %23 : vector<104x256xf32> to vector<104x256xbf16>
    %c0_18 = arith.constant 0 : index
    %c0_19 = arith.constant 0 : index
    %25 = vector.load %arg8[%c0_18, %c0_19] : memref<104x256xbf16, #tpu.memory_space<vmem>>, vector<104x256xbf16>
    tpu.vector_store %arg8[%c0_18, %c0_19], %24 {strides = array<i32>} : memref<104x256xbf16, #tpu.memory_space<vmem>>, vector<104x256xbf16>,
    return
  }
  func.func @transform_0(%arg0: i32) -> (i32, i32) {
    %c0_i32 = arith.constant 0 : i32
    %c0_i32_0 = arith.constant 0 : i32
    return %arg0, %c0_i32 : i32, i32
  }
  func.func @transform_1(%arg0: i32) -> (i32, i32) {
    %c0_i32 = arith.constant 0 : i32
    %c0_i32_0 = arith.constant 0 : i32
    %c0_i32_1 = arith.constant 0 : i32
    return %c0_i32, %c0_i32_0 : i32, i32
  }
  func.func @transform_2(%arg0: i32) -> (i32, i32) {
    %c0_i32 = arith.constant 0 : i32
    %c0_i32_0 = arith.constant 0 : i32
    %c0_i32_1 = arith.constant 0 : i32
    return %c0_i32, %c0_i32_0 : i32, i32
  }
  func.func @transform_3(%arg0: i32) -> (i32, i32) {
    %c0_i32 = arith.constant 0 : i32
    %c0_i32_0 = arith.constant 0 : i32
    %c0_i32_1 = arith.constant 0 : i32
    return %c0_i32, %c0_i32_0 : i32, i32
  }
  func.func @transform_4(%arg0: i32) -> (i32, i32) {
    %c0_i32 = arith.constant 0 : i32
    %c0_i32_0 = arith.constant 0 : i32
    %c0_i32_1 = arith.constant 0 : i32
    return %c0_i32, %c0_i32_0 : i32, i32
  }
  func.func @transform_5(%arg0: i32) -> (i32, i32) {
    %c0_i32 = arith.constant 0 : i32
    %c0_i32_0 = arith.constant 0 : i32
    %c0_i32_1 = arith.constant 0 : i32
    return %c0_i32, %c0_i32_0 : i32, i32
  }
  func.func @transform_6(%arg0: i32) -> (i32, i32) {
    %c0_i32 = arith.constant 0 : i32
    %c0_i32_0 = arith.constant 0 : i32
    %c0_i32_1 = arith.constant 0 : i32
    return %c0_i32, %c0_i32_0 : i32, i32
  }
  func.func @transform_7(%arg0: i32) -> (i32, i32) {
    %c0_i32 = arith.constant 0 : i32
    %c0_i32_0 = arith.constant 0 : i32
    return %arg0, %c0_i32 : i32, i32
  }
}

module attributes {stable_mosaic.version = 11 : i64} {
  func.func @_nin_block_kernel(%arg0: i32, %arg1: memref<24x2304xbf16, #tpu.memory_space<vmem>>, %arg2: memref<2304x384xbf16, #tpu.memory_space<vmem>>, %arg3: memref<1x384xf32, #tpu.memory_space<vmem>>, %arg4: memref<384x384xbf16, #tpu.memory_space<vmem>>, %arg5: memref<1x384xf32, #tpu.memory_space<vmem>>, %arg6: memref<384x384xbf16, #tpu.memory_space<vmem>>, %arg7: memref<1x384xf32, #tpu.memory_space<vmem>>, %arg8: memref<24x384xbf16, #tpu.memory_space<vmem>>) attributes {dimension_semantics = [#tpu.dimension_semantics<parallel>], iteration_bounds = array<i64: 1>, scalar_prefetch = 0 : i64, scratch_operands = 0 : i64, tpu.core_type = #tpu.core_type<tc>, window_params = [{transform_indices = @transform_0, window_bounds = array<i64: 24, 2304>}, {pipeline_mode = #tpu.pipeline_mode<synchronous>, transform_indices = @transform_1, window_bounds = array<i64: 2304, 384>}, {pipeline_mode = #tpu.pipeline_mode<synchronous>, transform_indices = @transform_2, window_bounds = array<i64: 1, 384>}, {pipeline_mode = #tpu.pipeline_mode<synchronous>, transform_indices = @transform_3, window_bounds = array<i64: 384, 384>}, {pipeline_mode = #tpu.pipeline_mode<synchronous>, transform_indices = @transform_4, window_bounds = array<i64: 1, 384>}, {pipeline_mode = #tpu.pipeline_mode<synchronous>, transform_indices = @transform_5, window_bounds = array<i64: 384, 384>}, {pipeline_mode = #tpu.pipeline_mode<synchronous>, transform_indices = @transform_6, window_bounds = array<i64: 1, 384>}, {transform_indices = @transform_7, window_bounds = array<i64: 24, 384>}]} {
    %c0 = arith.constant 0 : index
    %c0_0 = arith.constant 0 : index
    %0 = vector.load %arg1[%c0, %c0_0] : memref<24x2304xbf16, #tpu.memory_space<vmem>>, vector<24x2304xbf16>
    %c0_1 = arith.constant 0 : index
    %c0_2 = arith.constant 0 : index
    %1 = vector.load %arg2[%c0_1, %c0_2] : memref<2304x384xbf16, #tpu.memory_space<vmem>>, vector<2304x384xbf16>
    %cst = arith.constant dense<0.000000e+00> : vector<24x384xf32>
    %2 = tpu.matmul %0, %1, %cst {dimension_numbers = #tpu.dot_dimension_numbers<[1], [0], [0], [1], [0, 0, 1, 1], [], []>} : vector<24x2304xbf16>, vector<2304x384xbf16>, vector<24x384xf32> -> vector<24x384xf32>
    %c0_3 = arith.constant 0 : index
    %c0_4 = arith.constant 0 : index
    %3 = vector.load %arg3[%c0_3, %c0_4] : memref<1x384xf32, #tpu.memory_space<vmem>>, vector<1x384xf32>
    %4 = vector.broadcast %3 : vector<1x384xf32> to vector<24x384xf32>
    %5 = arith.addf %2, %4 : vector<24x384xf32>
    %cst_5 = arith.constant 0.000000e+00 : f32
    %6 = vector.broadcast %cst_5 : f32 to vector<24x384xf32>
    %7 = arith.maximumf %5, %6 : vector<24x384xf32>
    %8 = arith.truncf %7 : vector<24x384xf32> to vector<24x384xbf16>
    %c0_6 = arith.constant 0 : index
    %c0_7 = arith.constant 0 : index
    %9 = vector.load %arg4[%c0_6, %c0_7] : memref<384x384xbf16, #tpu.memory_space<vmem>>, vector<384x384xbf16>
    %cst_8 = arith.constant dense<0.000000e+00> : vector<24x384xf32>
    %10 = tpu.matmul %8, %9, %cst_8 {dimension_numbers = #tpu.dot_dimension_numbers<[1], [0], [0], [1], [0, 0, 1, 1], [], []>} : vector<24x384xbf16>, vector<384x384xbf16>, vector<24x384xf32> -> vector<24x384xf32>
    %c0_9 = arith.constant 0 : index
    %c0_10 = arith.constant 0 : index
    %11 = vector.load %arg5[%c0_9, %c0_10] : memref<1x384xf32, #tpu.memory_space<vmem>>, vector<1x384xf32>
    %12 = vector.broadcast %11 : vector<1x384xf32> to vector<24x384xf32>
    %13 = arith.addf %10, %12 : vector<24x384xf32>
    %cst_11 = arith.constant 0.000000e+00 : f32
    %14 = vector.broadcast %cst_11 : f32 to vector<24x384xf32>
    %15 = arith.maximumf %13, %14 : vector<24x384xf32>
    %16 = arith.truncf %15 : vector<24x384xf32> to vector<24x384xbf16>
    %c0_12 = arith.constant 0 : index
    %c0_13 = arith.constant 0 : index
    %17 = vector.load %arg6[%c0_12, %c0_13] : memref<384x384xbf16, #tpu.memory_space<vmem>>, vector<384x384xbf16>
    %cst_14 = arith.constant dense<0.000000e+00> : vector<24x384xf32>
    %18 = tpu.matmul %16, %17, %cst_14 {dimension_numbers = #tpu.dot_dimension_numbers<[1], [0], [0], [1], [0, 0, 1, 1], [], []>} : vector<24x384xbf16>, vector<384x384xbf16>, vector<24x384xf32> -> vector<24x384xf32>
    %c0_15 = arith.constant 0 : index
    %c0_16 = arith.constant 0 : index
    %19 = vector.load %arg7[%c0_15, %c0_16] : memref<1x384xf32, #tpu.memory_space<vmem>>, vector<1x384xf32>
    %20 = vector.broadcast %19 : vector<1x384xf32> to vector<24x384xf32>
    %21 = arith.addf %18, %20 : vector<24x384xf32>
    %cst_17 = arith.constant 0.000000e+00 : f32
    %22 = vector.broadcast %cst_17 : f32 to vector<24x384xf32>
    %23 = arith.maximumf %21, %22 : vector<24x384xf32>
    %24 = arith.truncf %23 : vector<24x384xf32> to vector<24x384xbf16>
    %c0_18 = arith.constant 0 : index
    %c0_19 = arith.constant 0 : index
    %25 = vector.load %arg8[%c0_18, %c0_19] : memref<24x384xbf16, #tpu.memory_space<vmem>>, vector<24x384xbf16>
    tpu.vector_store %arg8[%c0_18, %c0_19], %24 {strides = array<i32>} : memref<24x384xbf16, #tpu.memory_space<vmem>>, vector<24x384xbf16>,
    return
  }
  func.func @transform_0(%arg0: i32) -> (i32, i32) {
    %c0_i32 = arith.constant 0 : i32
    %c0_i32_0 = arith.constant 0 : i32
    return %arg0, %c0_i32 : i32, i32
  }
  func.func @transform_1(%arg0: i32) -> (i32, i32) {
    %c0_i32 = arith.constant 0 : i32
    %c0_i32_0 = arith.constant 0 : i32
    %c0_i32_1 = arith.constant 0 : i32
    return %c0_i32, %c0_i32_0 : i32, i32
  }
  func.func @transform_2(%arg0: i32) -> (i32, i32) {
    %c0_i32 = arith.constant 0 : i32
    %c0_i32_0 = arith.constant 0 : i32
    %c0_i32_1 = arith.constant 0 : i32
    return %c0_i32, %c0_i32_0 : i32, i32
  }
  func.func @transform_3(%arg0: i32) -> (i32, i32) {
    %c0_i32 = arith.constant 0 : i32
    %c0_i32_0 = arith.constant 0 : i32
    %c0_i32_1 = arith.constant 0 : i32
    return %c0_i32, %c0_i32_0 : i32, i32
  }
  func.func @transform_4(%arg0: i32) -> (i32, i32) {
    %c0_i32 = arith.constant 0 : i32
    %c0_i32_0 = arith.constant 0 : i32
    %c0_i32_1 = arith.constant 0 : i32
    return %c0_i32, %c0_i32_0 : i32, i32
  }
  func.func @transform_5(%arg0: i32) -> (i32, i32) {
    %c0_i32 = arith.constant 0 : i32
    %c0_i32_0 = arith.constant 0 : i32
    %c0_i32_1 = arith.constant 0 : i32
    return %c0_i32, %c0_i32_0 : i32, i32
  }
  func.func @transform_6(%arg0: i32) -> (i32, i32) {
    %c0_i32 = arith.constant 0 : i32
    %c0_i32_0 = arith.constant 0 : i32
    %c0_i32_1 = arith.constant 0 : i32
    return %c0_i32, %c0_i32_0 : i32, i32
  }
  func.func @transform_7(%arg0: i32) -> (i32, i32) {
    %c0_i32 = arith.constant 0 : i32
    %c0_i32_0 = arith.constant 0 : i32
    return %arg0, %c0_i32 : i32, i32
  }
}

module attributes {stable_mosaic.version = 11 : i64} {
  func.func @_nin_block_kernel(%arg0: i32, %arg1: memref<8x3456xbf16, #tpu.memory_space<vmem>>, %arg2: memref<3456x128xbf16, #tpu.memory_space<vmem>>, %arg3: memref<1x128xf32, #tpu.memory_space<vmem>>, %arg4: memref<128x128xbf16, #tpu.memory_space<vmem>>, %arg5: memref<1x128xf32, #tpu.memory_space<vmem>>, %arg6: memref<128x128xbf16, #tpu.memory_space<vmem>>, %arg7: memref<1x128xf32, #tpu.memory_space<vmem>>, %arg8: memref<8x128xbf16, #tpu.memory_space<vmem>>) attributes {dimension_semantics = [#tpu.dimension_semantics<parallel>], iteration_bounds = array<i64: 1>, scalar_prefetch = 0 : i64, scratch_operands = 0 : i64, tpu.core_type = #tpu.core_type<tc>, window_params = [{transform_indices = @transform_0, window_bounds = array<i64: 8, 3456>}, {pipeline_mode = #tpu.pipeline_mode<synchronous>, transform_indices = @transform_1, window_bounds = array<i64: 3456, 128>}, {pipeline_mode = #tpu.pipeline_mode<synchronous>, transform_indices = @transform_2, window_bounds = array<i64: 1, 128>}, {pipeline_mode = #tpu.pipeline_mode<synchronous>, transform_indices = @transform_3, window_bounds = array<i64: 128, 128>}, {pipeline_mode = #tpu.pipeline_mode<synchronous>, transform_indices = @transform_4, window_bounds = array<i64: 1, 128>}, {pipeline_mode = #tpu.pipeline_mode<synchronous>, transform_indices = @transform_5, window_bounds = array<i64: 128, 128>}, {pipeline_mode = #tpu.pipeline_mode<synchronous>, transform_indices = @transform_6, window_bounds = array<i64: 1, 128>}, {transform_indices = @transform_7, window_bounds = array<i64: 8, 128>}]} {
    %c0 = arith.constant 0 : index
    %c0_0 = arith.constant 0 : index
    %0 = vector.load %arg1[%c0, %c0_0] : memref<8x3456xbf16, #tpu.memory_space<vmem>>, vector<8x3456xbf16>
    %c0_1 = arith.constant 0 : index
    %c0_2 = arith.constant 0 : index
    %1 = vector.load %arg2[%c0_1, %c0_2] : memref<3456x128xbf16, #tpu.memory_space<vmem>>, vector<3456x128xbf16>
    %cst = arith.constant dense<0.000000e+00> : vector<8x128xf32>
    %2 = tpu.matmul %0, %1, %cst {dimension_numbers = #tpu.dot_dimension_numbers<[1], [0], [0], [1], [0, 0, 1, 1], [], []>} : vector<8x3456xbf16>, vector<3456x128xbf16>, vector<8x128xf32> -> vector<8x128xf32>
    %c0_3 = arith.constant 0 : index
    %c0_4 = arith.constant 0 : index
    %3 = vector.load %arg3[%c0_3, %c0_4] : memref<1x128xf32, #tpu.memory_space<vmem>>, vector<1x128xf32>
    %4 = vector.broadcast %3 : vector<1x128xf32> to vector<8x128xf32>
    %5 = arith.addf %2, %4 : vector<8x128xf32>
    %cst_5 = arith.constant 0.000000e+00 : f32
    %6 = vector.broadcast %cst_5 : f32 to vector<8x128xf32>
    %7 = arith.maximumf %5, %6 : vector<8x128xf32>
    %8 = arith.truncf %7 : vector<8x128xf32> to vector<8x128xbf16>
    %c0_6 = arith.constant 0 : index
    %c0_7 = arith.constant 0 : index
    %9 = vector.load %arg4[%c0_6, %c0_7] : memref<128x128xbf16, #tpu.memory_space<vmem>>, vector<128x128xbf16>
    %cst_8 = arith.constant dense<0.000000e+00> : vector<8x128xf32>
    %10 = tpu.matmul %8, %9, %cst_8 {dimension_numbers = #tpu.dot_dimension_numbers<[1], [0], [0], [1], [0, 0, 1, 1], [], []>} : vector<8x128xbf16>, vector<128x128xbf16>, vector<8x128xf32> -> vector<8x128xf32>
    %c0_9 = arith.constant 0 : index
    %c0_10 = arith.constant 0 : index
    %11 = vector.load %arg5[%c0_9, %c0_10] : memref<1x128xf32, #tpu.memory_space<vmem>>, vector<1x128xf32>
    %12 = vector.broadcast %11 : vector<1x128xf32> to vector<8x128xf32>
    %13 = arith.addf %10, %12 : vector<8x128xf32>
    %cst_11 = arith.constant 0.000000e+00 : f32
    %14 = vector.broadcast %cst_11 : f32 to vector<8x128xf32>
    %15 = arith.maximumf %13, %14 : vector<8x128xf32>
    %16 = arith.truncf %15 : vector<8x128xf32> to vector<8x128xbf16>
    %c0_12 = arith.constant 0 : index
    %c0_13 = arith.constant 0 : index
    %17 = vector.load %arg6[%c0_12, %c0_13] : memref<128x128xbf16, #tpu.memory_space<vmem>>, vector<128x128xbf16>
    %cst_14 = arith.constant dense<0.000000e+00> : vector<8x128xf32>
    %18 = tpu.matmul %16, %17, %cst_14 {dimension_numbers = #tpu.dot_dimension_numbers<[1], [0], [0], [1], [0, 0, 1, 1], [], []>} : vector<8x128xbf16>, vector<128x128xbf16>, vector<8x128xf32> -> vector<8x128xf32>
    %c0_15 = arith.constant 0 : index
    %c0_16 = arith.constant 0 : index
    %19 = vector.load %arg7[%c0_15, %c0_16] : memref<1x128xf32, #tpu.memory_space<vmem>>, vector<1x128xf32>
    %20 = vector.broadcast %19 : vector<1x128xf32> to vector<8x128xf32>
    %21 = arith.addf %18, %20 : vector<8x128xf32>
    %cst_17 = arith.constant 0.000000e+00 : f32
    %22 = vector.broadcast %cst_17 : f32 to vector<8x128xf32>
    %23 = arith.maximumf %21, %22 : vector<8x128xf32>
    %24 = arith.truncf %23 : vector<8x128xf32> to vector<8x128xbf16>
    %c0_18 = arith.constant 0 : index
    %c0_19 = arith.constant 0 : index
    %25 = vector.load %arg8[%c0_18, %c0_19] : memref<8x128xbf16, #tpu.memory_space<vmem>>, vector<8x128xbf16>
    tpu.vector_store %arg8[%c0_18, %c0_19], %24 {strides = array<i32>} : memref<8x128xbf16, #tpu.memory_space<vmem>>, vector<8x128xbf16>,
    return
  }
  func.func @transform_0(%arg0: i32) -> (i32, i32) {
    %c0_i32 = arith.constant 0 : i32
    %c0_i32_0 = arith.constant 0 : i32
    return %arg0, %c0_i32 : i32, i32
  }
  func.func @transform_1(%arg0: i32) -> (i32, i32) {
    %c0_i32 = arith.constant 0 : i32
    %c0_i32_0 = arith.constant 0 : i32
    %c0_i32_1 = arith.constant 0 : i32
    return %c0_i32, %c0_i32_0 : i32, i32
  }
  func.func @transform_2(%arg0: i32) -> (i32, i32) {
    %c0_i32 = arith.constant 0 : i32
    %c0_i32_0 = arith.constant 0 : i32
    %c0_i32_1 = arith.constant 0 : i32
    return %c0_i32, %c0_i32_0 : i32, i32
  }
  func.func @transform_3(%arg0: i32) -> (i32, i32) {
    %c0_i32 = arith.constant 0 : i32
    %c0_i32_0 = arith.constant 0 : i32
    %c0_i32_1 = arith.constant 0 : i32
    return %c0_i32, %c0_i32_0 : i32, i32
  }
  func.func @transform_4(%arg0: i32) -> (i32, i32) {
    %c0_i32 = arith.constant 0 : i32
    %c0_i32_0 = arith.constant 0 : i32
    %c0_i32_1 = arith.constant 0 : i32
    return %c0_i32, %c0_i32_0 : i32, i32
  }
  func.func @transform_5(%arg0: i32) -> (i32, i32) {
    %c0_i32 = arith.constant 0 : i32
    %c0_i32_0 = arith.constant 0 : i32
    %c0_i32_1 = arith.constant 0 : i32
    return %c0_i32, %c0_i32_0 : i32, i32
  }
  func.func @transform_6(%arg0: i32) -> (i32, i32) {
    %c0_i32 = arith.constant 0 : i32
    %c0_i32_0 = arith.constant 0 : i32
    %c0_i32_1 = arith.constant 0 : i32
    return %c0_i32, %c0_i32_0 : i32, i32
  }
  func.func @transform_7(%arg0: i32) -> (i32, i32) {
    %c0_i32 = arith.constant 0 : i32
    %c0_i32_0 = arith.constant 0 : i32
    return %arg0, %c0_i32 : i32, i32
  }
}

</mosaic_0001>

<llo_original>
// kernel: net_forward.4
$region0: #{net_forward.4}
  #allocation0 [shape = 'u32[]', space=smem, size = 0x4, offset = 0x4, fixed_abs, tag = 'smem constant byte address 0x4 - core index']
  #allocation1 [shape = 'u32[72,128]{1,0:T(1,128)}', space=vmem, size = 0x9000, scoped, tag = 'internal scratch']
  %s0 = inlined_call_operand.vmem [shape: bf16[456,121], index: 0, kind: input, shape index: {}]
  %s1 = inlined_call_operand.vmem [shape: bf16[121,128], index: 1, kind: input, shape index: {}]
  %s2 = inlined_call_operand.vmem [shape: f32[1,128], index: 2, kind: input, shape index: {}]
  %s3 = inlined_call_operand.vmem [shape: bf16[128,128], index: 3, kind: input, shape index: {}]
  %s4 = inlined_call_operand.vmem [shape: f32[1,128], index: 4, kind: input, shape index: {}]
  %s5 = inlined_call_operand.vmem [shape: bf16[128,128], index: 5, kind: input, shape index: {}]
  %s6 = inlined_call_operand.vmem [shape: f32[1,128], index: 6, kind: input, shape index: {}]
  %s7 = inlined_call_operand.vmem [shape: bf16[456,128], index: 7, kind: output, shape index: {}]
  %s8 = sld [smem:[#allocation0]]
  $region38: #{net_forward.4} parent=0
    _
  %s10 = ssub.s32 1, %s8
  %s11 = scalar_select 0, %s10, %s8
  // Predicated region
  $region2: #{net_forward.4} parent=0 // pred_check
    _
  $region3: #{net_forward.4} parent=0 // pred_check_branch
    %13 = sbr.rel (0) target = $region5
  $region4: #{net_forward.4} parent=0 // pred_region
    _
  $region5: #{net_forward.4} parent=0 // pred_fallthru
    _
  // Predicated region
  $region6: #{net_forward.4} parent=0 // pred_check
    _
  $region7: #{net_forward.4} parent=0 // pred_check_branch
    %15 = sbr.rel (0) target = $region9
  $region8: #{net_forward.4} parent=0 // pred_region
    _
  $region9: #{net_forward.4} parent=0 // pred_fallthru
    _
  // Predicated region
  $region10: #{net_forward.4} parent=0 // pred_check
    _
  $region11: #{net_forward.4} parent=0 // pred_check_branch
    %17 = sbr.rel (0) target = $region13
  $region12: #{net_forward.4} parent=0 // pred_region
    _
  $region13: #{net_forward.4} parent=0 // pred_fallthru
    _
  // Predicated region
  $region14: #{net_forward.4} parent=0 // pred_check
    _
  $region15: #{net_forward.4} parent=0 // pred_check_branch
    %19 = sbr.rel (0) target = $region17
  $region16: #{net_forward.4} parent=0 // pred_region
    _
  $region17: #{net_forward.4} parent=0 // pred_fallthru
    _
  // Predicated region
  $region18: #{net_forward.4} parent=0 // pred_check
    _
  $region19: #{net_forward.4} parent=0 // pred_check_branch
    %21 = sbr.rel (0) target = $region21
  $region20: #{net_forward.4} parent=0 // pred_region
    _
  $region21: #{net_forward.4} parent=0 // pred_fallthru
    _
  // Predicated region
  $region22: #{net_forward.4} parent=0 // pred_check
    _
  $region23: #{net_forward.4} parent=0 // pred_check_branch
    %23 = sbr.rel (0) target = $region25
  $region24: #{net_forward.4} parent=0 // pred_region
    _
  $region25: #{net_forward.4} parent=0 // pred_fallthru
    _
  // Predicated region
  $region26: #{net_forward.4} parent=0 // pred_check
    _
  $region27: #{net_forward.4} parent=0 // pred_check_branch
    %25 = sbr.rel (0) target = $region29
  $region28: #{net_forward.4} parent=0 // pred_region
    _
  $region29: #{net_forward.4} parent=0 // pred_fallthru
    _
  %v26 = vld [vmem:[%s0] sm:$0xf]
  %v27 = vld [vmem:[%s0 + $0x4] sm:$0xf]
  %v28 = vld [vmem:[%s0 + $0x8] sm:$0xf]
  %v29 = vld [vmem:[%s0 + $0xc] sm:$0xf]
  %v30 = vld [vmem:[%s0 + $0x10] sm:$0xf]
  %v31 = vld [vmem:[%s0 + $0x14] sm:$0xf]
  %v32 = vld [vmem:[%s0 + $0x18] sm:$0xf]
  %v33 = vld [vmem:[%s0 + $0x1c] sm:$0xf]
  %v34 = vld [vmem:[%s0 + $0x20] sm:$0xf]
  %v35 = vld [vmem:[%s0 + $0x24] sm:$0xf]
  %v36 = vld [vmem:[%s0 + $0x28] sm:$0xf]
  %v37 = vld [vmem:[%s0 + $0x2c] sm:$0xf]
  %v38 = vld [vmem:[%s0 + $0x30] sm:$0xf]
  %v39 = vld [vmem:[%s0 + $0x34] sm:$0xf]
  %v40 = vld [vmem:[%s0 + $0x38] sm:$0xf]
  %v41 = vld [vmem:[%s0 + $0x3c] sm:$0xf]
  %v42 = vld [vmem:[%s0 + $0x40] sm:$0xf]
  %v43 = vld [vmem:[%s0 + $0x44] sm:$0xf]
  %v44 = vld [vmem:[%s0 + $0x48] sm:$0xf]
  %v45 = vld [vmem:[%s0 + $0x4c] sm:$0xf]
  %v46 = vld [vmem:[%s0 + $0x50] sm:$0xf]
  %v47 = vld [vmem:[%s0 + $0x54] sm:$0xf]
  %v48 = vld [vmem:[%s0 + $0x58] sm:$0xf]
  %v49 = vld [vmem:[%s0 + $0x5c] sm:$0xf]
  %v50 = vld [vmem:[%s0 + $0x60] sm:$0xf]
  %v51 = vld [vmem:[%s0 + $0x64] sm:$0xf]
  %v52 = vld [vmem:[%s0 + $0x68] sm:$0xf]
  %v53 = vld [vmem:[%s0 + $0x6c] sm:$0xf]
  %v54 = vld [vmem:[%s0 + $0x70] sm:$0xf]
  %v55 = vld [vmem:[%s0 + $0x74] sm:$0xf]
  %v56 = vld [vmem:[%s0 + $0x78] sm:$0xf]
  %v57 = vld [vmem:[%s0 + $0x7c] sm:$0xf]
  %v58 = vld [vmem:[%s0 + $0x80] sm:$0xf]
  %v59 = vld [vmem:[%s0 + $0x84] sm:$0xf]
  %v60 = vld [vmem:[%s0 + $0x88] sm:$0xf]
  %v61 = vld [vmem:[%s0 + $0x8c] sm:$0xf]
  %v62 = vld [vmem:[%s0 + $0x90] sm:$0xf]
  %v63 = vld [vmem:[%s0 + $0x94] sm:$0xf]
  %v64 = vld [vmem:[%s0 + $0x98] sm:$0xf]
  %v65 = vld [vmem:[%s0 + $0x9c] sm:$0xf]
  %v66 = vld [vmem:[%s0 + $0xa0] sm:$0xf]
  %v67 = vld [vmem:[%s0 + $0xa4] sm:$0xf]
  %v68 = vld [vmem:[%s0 + $0xa8] sm:$0xf]
  %v69 = vld [vmem:[%s0 + $0xac] sm:$0xf]
  %v70 = vld [vmem:[%s0 + $0xb0] sm:$0xf]
  %v71 = vld [vmem:[%s0 + $0xb4] sm:$0xf]
  %v72 = vld [vmem:[%s0 + $0xb8] sm:$0xf]
  %v73 = vld [vmem:[%s0 + $0xbc] sm:$0xf]
  %v74 = vld [vmem:[%s0 + $0xc0] sm:$0xf]
  %v75 = vld [vmem:[%s0 + $0xc4] sm:$0xf]
  %v76 = vld [vmem:[%s0 + $0xc8] sm:$0xf]
  %v77 = vld [vmem:[%s0 + $0xcc] sm:$0xf]
  %v78 = vld [vmem:[%s0 + $0xd0] sm:$0xf]
  %v79 = vld [vmem:[%s0 + $0xd4] sm:$0xf]
  %v80 = vld [vmem:[%s0 + $0xd8] sm:$0xf]
  %v81 = vld [vmem:[%s0 + $0xdc] sm:$0xf]
  %v82 = vld [vmem:[%s0 + $0xe0] sm:$0xf]
  %v83 = vld [vmem:[%s1] sm:$0xf]
  %v84 = vld [vmem:[%s1 + $0x4] sm:$0xf]
  %v85 = vld [vmem:[%s1 + $0x8] sm:$0xf]
  %v86 = vld [vmem:[%s1 + $0xc] sm:$0xf]
  %v87 = vld [vmem:[%s1 + $0x10] sm:$0xf]
  %v88 = vld [vmem:[%s1 + $0x14] sm:$0xf]
  %v89 = vld [vmem:[%s1 + $0x18] sm:$0xf]
  %v90 = vld [vmem:[%s1 + $0x1c] sm:$0xf]
  %v91 = vld [vmem:[%s1 + $0x20] sm:$0xf]
  %v92 = vld [vmem:[%s1 + $0x24] sm:$0xf]
  %v93 = vld [vmem:[%s1 + $0x28] sm:$0xf]
  %v94 = vld [vmem:[%s1 + $0x2c] sm:$0xf]
  %v95 = vld [vmem:[%s1 + $0x30] sm:$0xf]
  %v96 = vld [vmem:[%s1 + $0x34] sm:$0xf]
  %v97 = vld [vmem:[%s1 + $0x38] sm:$0xf]
  %v98 = vld [vmem:[%s1 + $0x3c] sm:$0x1]
  %v99 = vld [vmem:[%s2] sm:$0x1]
  %v101 = vperm.slane %v99, 0
  %v160 = vunpack.c.l.b16 %v26
  %v161 = vunpack.c.l.b16 %v27
  %v162 = vunpack.c.l.b16 %v28
  %v163 = vunpack.c.l.b16 %v29
  %v164 = vunpack.c.l.b16 %v30
  %v165 = vunpack.c.l.b16 %v31
  %v166 = vunpack.c.l.b16 %v32
  %v167 = vunpack.c.l.b16 %v33
  %v168 = vunpack.c.l.b16 %v34
  %v169 = vunpack.c.l.b16 %v35
  %v170 = vunpack.c.l.b16 %v36
  %v171 = vunpack.c.l.b16 %v37
  %v172 = vunpack.c.l.b16 %v38
  %v173 = vunpack.c.l.b16 %v39
  %v174 = vunpack.c.l.b16 %v40
  %v175 = vunpack.c.l.b16 %v41
  %v176 = vunpack.c.l.b16 %v42
  %v177 = vunpack.c.l.b16 %v43
  %v178 = vunpack.c.l.b16 %v44
  %v179 = vunpack.c.l.b16 %v45
  %v180 = vunpack.c.l.b16 %v46
  %v181 = vunpack.c.l.b16 %v47
  %v182 = vunpack.c.l.b16 %v48
  %v183 = vunpack.c.l.b16 %v49
  %v184 = vunpack.c.l.b16 %v50
  %v185 = vunpack.c.l.b16 %v51
  %v186 = vunpack.c.l.b16 %v52
  %v187 = vunpack.c.l.b16 %v53
  %v188 = vunpack.c.l.b16 %v54
  %v189 = vunpack.c.l.b16 %v55
  %v190 = vunpack.c.l.b16 %v56
  %v191 = vunpack.c.l.b16 %v57
  %v192 = vunpack.c.l.b16 %v58
  %v193 = vunpack.c.l.b16 %v59
  %v194 = vunpack.c.l.b16 %v60
  %v195 = vunpack.c.l.b16 %v61
  %v196 = vunpack.c.l.b16 %v62
  %v197 = vunpack.c.l.b16 %v63
  %v198 = vunpack.c.l.b16 %v64
  %v199 = vunpack.c.l.b16 %v65
  %v200 = vunpack.c.l.b16 %v66
  %v201 = vunpack.c.l.b16 %v67
  %v202 = vunpack.c.l.b16 %v68
  %v203 = vunpack.c.l.b16 %v69
  %v204 = vunpack.c.l.b16 %v70
  %v205 = vunpack.c.l.b16 %v71
  %v206 = vunpack.c.l.b16 %v72
  %v207 = vunpack.c.l.b16 %v73
  %v208 = vunpack.c.l.b16 %v74
  %v209 = vunpack.c.l.b16 %v75
  %v210 = vunpack.c.l.b16 %v76
  %v211 = vunpack.c.l.b16 %v77
  %v212 = vunpack.c.l.b16 %v78
  %v213 = vunpack.c.l.b16 %v79
  %v214 = vunpack.c.l.b16 %v80
  %v215 = vunpack.c.l.b16 %v81
  %v216 = vunpack.c.l.b16 %v82
  %v217 = vpack.c.b16 %v161, %v160
  %v218 = vpack.c.b16 %v163, %v162
  %v219 = vpack.c.b16 %v165, %v164
  %v220 = vpack.c.b16 %v167, %v166
  %v221 = vpack.c.b16 %v169, %v168
  %v222 = vpack.c.b16 %v171, %v170
  %v223 = vpack.c.b16 %v173, %v172
  %v224 = vpack.c.b16 %v175, %v174
  %v225 = vpack.c.b16 %v177, %v176
  %v226 = vpack.c.b16 %v179, %v178
  %v227 = vpack.c.b16 %v181, %v180
  %v228 = vpack.c.b16 %v183, %v182
  %v229 = vpack.c.b16 %v185, %v184
  %v230 = vpack.c.b16 %v187, %v186
  %v231 = vpack.c.b16 %v189, %v188
  %v232 = vpack.c.b16 %v191, %v190
  %v233 = vpack.c.b16 %v193, %v192
  %v234 = vpack.c.b16 %v195, %v194
  %v235 = vpack.c.b16 %v197, %v196
  %v236 = vpack.c.b16 %v199, %v198
  %v237 = vpack.c.b16 %v201, %v200
  %v238 = vpack.c.b16 %v203, %v202
  %v239 = vpack.c.b16 %v205, %v204
  %v240 = vpack.c.b16 %v207, %v206
  %v241 = vpack.c.b16 %v209, %v208
  %v242 = vpack.c.b16 %v211, %v210
  %v243 = vpack.c.b16 %v213, %v212
  %v244 = vpack.c.b16 %v215, %v214
  %v245 = vpack.c.b16 %v216, %v216
  %v262 = vunpack.c.l.b16 %v83
  %v263 = vunpack.c.l.b16 %v84
  %v264 = vunpack.c.l.b16 %v85
  %v265 = vunpack.c.l.b16 %v86
  %v266 = vunpack.c.l.b16 %v87
  %v267 = vunpack.c.l.b16 %v88
  %v268 = vunpack.c.l.b16 %v89
  %v269 = vunpack.c.l.b16 %v90
  %v270 = vunpack.c.l.b16 %v91
  %v271 = vunpack.c.l.b16 %v92
  %v272 = vunpack.c.l.b16 %v93
  %v273 = vunpack.c.l.b16 %v94
  %v274 = vunpack.c.l.b16 %v95
  %v275 = vunpack.c.l.b16 %v96
  %v276 = vunpack.c.l.b16 %v97
  %v277 = vunpack.c.l.b16 %v98
  %v278 = vpack.c.b16 %v263, %v262
  %v279 = vpack.c.b16 %v265, %v264
  %v280 = vpack.c.b16 %v267, %v266
  %v281 = vpack.c.b16 %v269, %v268
  %v282 = vpack.c.b16 %v271, %v270
  %v283 = vpack.c.b16 %v273, %v272
  %v284 = vpack.c.b16 %v275, %v274
  %v285 = vpack.c.b16 %v277, %v276
  %vm293 = vcmask 990208
  %v295 = vsel %vm293, %v217, 0
  %v298 = vsel %vm293, %v218, 0
  %v301 = vsel %vm293, %v219, 0
  %v304 = vsel %vm293, %v220, 0
  %v307 = vsel %vm293, %v221, 0
  %v310 = vsel %vm293, %v222, 0
  %v313 = vsel %vm293, %v223, 0
  %v316 = vsel %vm293, %v224, 0
  %v319 = vsel %vm293, %v225, 0
  %v322 = vsel %vm293, %v226, 0
  %v325 = vsel %vm293, %v227, 0
  %v328 = vsel %vm293, %v228, 0
  %v331 = vsel %vm293, %v229, 0
  %v334 = vsel %vm293, %v230, 0
  %v337 = vsel %vm293, %v231, 0
  %v340 = vsel %vm293, %v232, 0
  %v343 = vsel %vm293, %v233, 0
  %v346 = vsel %vm293, %v234, 0
  %v349 = vsel %vm293, %v235, 0
  %v352 = vsel %vm293, %v236, 0
  %v355 = vsel %vm293, %v237, 0
  %v358 = vsel %vm293, %v238, 0
  %v361 = vsel %vm293, %v239, 0
  %v364 = vsel %vm293, %v240, 0
  %v367 = vsel %vm293, %v241, 0
  %v370 = vsel %vm293, %v242, 0
  %v373 = vsel %vm293, %v243, 0
  %v376 = vsel %vm293, %v244, 0
  %v379 = vsel %vm293, %v245, 0
  %vm381 = vcmask 1043456
  %vm382 = vcmask 1044480
  %v383 = vsel %vm381, 4294967295, 65535
  %v384 = vsel %vm382, %v383, 0
  %v386 = vand.u32 %v285, %v384
  %388 = vmatpush.bf16.msra.mxu0 %v386
  %389 = vmatpush.bf16.msra.mxu0 %v284
  %390 = vmatpush.bf16.msra.mxu0 %v283
  %391 = vmatpush.bf16.msra.mxu0 %v282
  %392 = vmatpush.bf16.msra.mxu0 %v281
  %393 = vmatpush.bf16.msra.mxu0 %v280
  %394 = vmatpush.bf16.msra.mxu0 %v279
  %395 = vmatpush.bf16.msra.mxu0 %v278
  %396 = vmatmul.bf16.gmra.mxu0 %v295
  %v397 = vpop.f32.mrf.mxu0
  %v398 = vadd.f32 %v101, %v397
  %v399 = vpop.f32.mrf.mxu0
  %v400 = vadd.f32 %v101, %v399
  %401 = vmatmul.bf16.gmra.mxu0 %v298
  %v402 = vpop.f32.mrf.mxu0
  %v403 = vadd.f32 %v101, %v402
  %v404 = vpop.f32.mrf.mxu0
  %v405 = vadd.f32 %v101, %v404
  %406 = vmatmul.bf16.gmra.mxu0 %v301
  %v407 = vpop.f32.mrf.mxu0
  %v408 = vadd.f32 %v101, %v407
  %v409 = vpop.f32.mrf.mxu0
  %v410 = vadd.f32 %v101, %v409
  %411 = vmatmul.bf16.gmra.mxu0 %v304
  %v412 = vpop.f32.mrf.mxu0
  %v413 = vadd.f32 %v101, %v412
  %v414 = vpop.f32.mrf.mxu0
  %v415 = vadd.f32 %v101, %v414
  %416 = vmatmul.bf16.gmra.mxu0 %v307
  %v417 = vpop.f32.mrf.mxu0
  %v418 = vadd.f32 %v101, %v417
  %v419 = vpop.f32.mrf.mxu0
  %v420 = vadd.f32 %v101, %v419
  %421 = vmatmul.bf16.gmra.mxu0 %v310
  %v422 = vpop.f32.mrf.mxu0
  %v423 = vadd.f32 %v101, %v422
  %v424 = vpop.f32.mrf.mxu0
  %v425 = vadd.f32 %v101, %v424
  %426 = vmatmul.bf16.gmra.mxu0 %v313
  %v427 = vpop.f32.mrf.mxu0
  %v428 = vadd.f32 %v101, %v427
  %v429 = vpop.f32.mrf.mxu0
  %v430 = vadd.f32 %v101, %v429
  %431 = vmatmul.bf16.gmra.mxu0 %v316
  %v432 = vpop.f32.mrf.mxu0
  %v433 = vadd.f32 %v101, %v432
  %v434 = vpop.f32.mrf.mxu0
  %v435 = vadd.f32 %v101, %v434
  %436 = vmatmul.bf16.gmra.mxu0 %v319
  %v437 = vpop.f32.mrf.mxu0
  %v438 = vadd.f32 %v101, %v437
  %v439 = vpop.f32.mrf.mxu0
  %v440 = vadd.f32 %v101, %v439
  %441 = vmatmul.bf16.gmra.mxu0 %v322
  %v442 = vpop.f32.mrf.mxu0
  %v443 = vadd.f32 %v101, %v442
  %v444 = vpop.f32.mrf.mxu0
  %v445 = vadd.f32 %v101, %v444
  %446 = vmatmul.bf16.gmra.mxu0 %v325
  %v447 = vpop.f32.mrf.mxu0
  %v448 = vadd.f32 %v101, %v447
  %v449 = vpop.f32.mrf.mxu0
  %v450 = vadd.f32 %v101, %v449
  %451 = vmatmul.bf16.gmra.mxu0 %v328
  %v452 = vpop.f32.mrf.mxu0
  %v453 = vadd.f32 %v101, %v452
  %v454 = vpop.f32.mrf.mxu0
  %v455 = vadd.f32 %v101, %v454
  %456 = vmatmul.bf16.gmra.mxu0 %v331
  %v457 = vpop.f32.mrf.mxu0
  %v458 = vadd.f32 %v101, %v457
  %v459 = vpop.f32.mrf.mxu0
  %v460 = vadd.f32 %v101, %v459
  %461 = vmatmul.bf16.gmra.mxu0 %v334
  %v462 = vpop.f32.mrf.mxu0
  %v463 = vadd.f32 %v101, %v462
  %v464 = vpop.f32.mrf.mxu0
  %v465 = vadd.f32 %v101, %v464
  %466 = vmatmul.bf16.gmra.mxu0 %v337
  %v467 = vpop.f32.mrf.mxu0
  %v468 = vadd.f32 %v101, %v467
  %v469 = vpop.f32.mrf.mxu0
  %v470 = vadd.f32 %v101, %v469
  %471 = vmatmul.bf16.gmra.mxu0 %v340
  %v472 = vpop.f32.mrf.mxu0
  %v473 = vadd.f32 %v101, %v472
  %v474 = vpop.f32.mrf.mxu0
  %v475 = vadd.f32 %v101, %v474
  %476 = vmatmul.bf16.gmra.mxu0 %v343
  %v477 = vpop.f32.mrf.mxu0
  %v478 = vadd.f32 %v101, %v477
  %v479 = vpop.f32.mrf.mxu0
  %v480 = vadd.f32 %v101, %v479
  %481 = vmatmul.bf16.gmra.mxu0 %v346
  %v482 = vpop.f32.mrf.mxu0
  %v483 = vadd.f32 %v101, %v482
  %v484 = vpop.f32.mrf.mxu0
  %v485 = vadd.f32 %v101, %v484
  %486 = vmatmul.bf16.gmra.mxu0 %v349
  %v487 = vpop.f32.mrf.mxu0
  %v488 = vadd.f32 %v101, %v487
  %v489 = vpop.f32.mrf.mxu0
  %v490 = vadd.f32 %v101, %v489
  %491 = vmatmul.bf16.gmra.mxu0 %v352
  %v492 = vpop.f32.mrf.mxu0
  %v493 = vadd.f32 %v101, %v492
  %v494 = vpop.f32.mrf.mxu0
  %v495 = vadd.f32 %v101, %v494
  %496 = vmatmul.bf16.gmra.mxu0 %v355
  %v497 = vpop.f32.mrf.mxu0
  %v498 = vadd.f32 %v101, %v497
  %v499 = vpop.f32.mrf.mxu0
  %v500 = vadd.f32 %v101, %v499
  %501 = vmatmul.bf16.gmra.mxu0 %v358
  %v502 = vpop.f32.mrf.mxu0
  %v503 = vadd.f32 %v101, %v502
  %v504 = vpop.f32.mrf.mxu0
  %v505 = vadd.f32 %v101, %v504
  %506 = vmatmul.bf16.gmra.mxu0 %v361
  %v507 = vpop.f32.mrf.mxu0
  %v508 = vadd.f32 %v101, %v507
  %v509 = vpop.f32.mrf.mxu0
  %v510 = vadd.f32 %v101, %v509
  %511 = vmatmul.bf16.gmra.mxu0 %v364
  %v512 = vpop.f32.mrf.mxu0
  %v513 = vadd.f32 %v101, %v512
  %v514 = vpop.f32.mrf.mxu0
  %v515 = vadd.f32 %v101, %v514
  %516 = vmatmul.bf16.gmra.mxu0 %v367
  %v517 = vpop.f32.mrf.mxu0
  %v518 = vadd.f32 %v101, %v517
  %v519 = vpop.f32.mrf.mxu0
  %v520 = vadd.f32 %v101, %v519
  %521 = vmatmul.bf16.gmra.mxu0 %v370
  %v522 = vpop.f32.mrf.mxu0
  %v523 = vadd.f32 %v101, %v522
  %v524 = vpop.f32.mrf.mxu0
  %v525 = vadd.f32 %v101, %v524
  %526 = vmatmul.bf16.gmra.mxu0 %v373
  %v527 = vpop.f32.mrf.mxu0
  %v528 = vadd.f32 %v101, %v527
  %v529 = vpop.f32.mrf.mxu0
  %v530 = vadd.f32 %v101, %v529
  %531 = vmatmul.bf16.gmra.mxu0 %v376
  %v532 = vpop.f32.mrf.mxu0
  %v533 = vadd.f32 %v101, %v532
  %v534 = vpop.f32.mrf.mxu0
  %v535 = vadd.f32 %v101, %v534
  %536 = vmatmul.bf16.gmra.mxu0 %v379
  %v537 = vpop.f32.mrf.mxu0
  %v538 = vadd.f32 %v101, %v537
  %v539 = vpop.f32.mrf.mxu0
  %540 = vdwg.mxu0
  %v541 = vmax.f32 %v398, 0.0
  %v542 = vmax.f32 %v400, 0.0
  %v543 = vmax.f32 %v403, 0.0
  %v544 = vmax.f32 %v405, 0.0
  %v545 = vmax.f32 %v408, 0.0
  %v546 = vmax.f32 %v410, 0.0
  %v547 = vmax.f32 %v413, 0.0
  %v548 = vmax.f32 %v415, 0.0
  %v549 = vmax.f32 %v418, 0.0
  %v550 = vmax.f32 %v420, 0.0
  %v551 = vmax.f32 %v423, 0.0
  %v552 = vmax.f32 %v425, 0.0
  %v553 = vmax.f32 %v428, 0.0
  %v554 = vmax.f32 %v430, 0.0
  %v555 = vmax.f32 %v433, 0.0
  %v556 = vmax.f32 %v435, 0.0
  %v557 = vmax.f32 %v438, 0.0
  %v558 = vmax.f32 %v440, 0.0
  %v559 = vmax.f32 %v443, 0.0
  %v560 = vmax.f32 %v445, 0.0
  %v561 = vmax.f32 %v448, 0.0
  %v562 = vmax.f32 %v450, 0.0
  %v563 = vmax.f32 %v453, 0.0
  %v564 = vmax.f32 %v455, 0.0
  %v565 = vmax.f32 %v458, 0.0
  %v566 = vmax.f32 %v460, 0.0
  %v567 = vmax.f32 %v463, 0.0
  %v568 = vmax.f32 %v465, 0.0
  %v569 = vmax.f32 %v468, 0.0
  %v570 = vmax.f32 %v470, 0.0
  %v571 = vmax.f32 %v473, 0.0
  %v572 = vmax.f32 %v475, 0.0
  %v573 = vmax.f32 %v478, 0.0
  %v574 = vmax.f32 %v480, 0.0
  %v575 = vmax.f32 %v483, 0.0
  %v576 = vmax.f32 %v485, 0.0
  %v577 = vmax.f32 %v488, 0.0
  %v578 = vmax.f32 %v490, 0.0
  %v579 = vmax.f32 %v493, 0.0
  %v580 = vmax.f32 %v495, 0.0
  %v581 = vmax.f32 %v498, 0.0
  %v582 = vmax.f32 %v500, 0.0
  %v583 = vmax.f32 %v503, 0.0
  %v584 = vmax.f32 %v505, 0.0
  %v585 = vmax.f32 %v508, 0.0
  %v586 = vmax.f32 %v510, 0.0
  %v587 = vmax.f32 %v513, 0.0
  %v588 = vmax.f32 %v515, 0.0
  %v589 = vmax.f32 %v518, 0.0
  %v590 = vmax.f32 %v520, 0.0
  %v591 = vmax.f32 %v523, 0.0
  %v592 = vmax.f32 %v525, 0.0
  %v593 = vmax.f32 %v528, 0.0
  %v594 = vmax.f32 %v530, 0.0
  %v595 = vmax.f32 %v533, 0.0
  %v596 = vmax.f32 %v535, 0.0
  %v597 = vmax.f32 %v538, 0.0
  %v598 = vpack.c.bf16 %v542, %v541
  %v599 = vpack.c.bf16 %v544, %v543
  %v600 = vpack.c.bf16 %v546, %v545
  %v601 = vpack.c.bf16 %v548, %v547
  %v602 = vpack.c.bf16 %v550, %v549
  %v603 = vpack.c.bf16 %v552, %v551
  %v604 = vpack.c.bf16 %v554, %v553
  %v605 = vpack.c.bf16 %v556, %v555
  %v606 = vpack.c.bf16 %v558, %v557
  %v607 = vpack.c.bf16 %v560, %v559
  %v608 = vpack.c.bf16 %v562, %v561
  %v609 = vpack.c.bf16 %v564, %v563
  %v610 = vpack.c.bf16 %v566, %v565
  %v611 = vpack.c.bf16 %v568, %v567
  %v612 = vpack.c.bf16 %v570, %v569
  %v613 = vpack.c.bf16 %v572, %v571
  %v614 = vpack.c.bf16 %v574, %v573
  %v615 = vpack.c.bf16 %v576, %v575
  %v616 = vpack.c.bf16 %v578, %v577
  %v617 = vpack.c.bf16 %v580, %v579
  %v618 = vpack.c.bf16 %v582, %v581
  %v619 = vpack.c.bf16 %v584, %v583
  %v620 = vpack.c.bf16 %v586, %v585
  %v621 = vpack.c.bf16 %v588, %v587
  %v622 = vpack.c.bf16 %v590, %v589
  %v623 = vpack.c.bf16 %v592, %v591
  %v624 = vpack.c.bf16 %v594, %v593
  %v625 = vpack.c.bf16 %v596, %v595
  %v626 = vpack.c.bf16 %v597, %v597
  %v627 = vld [vmem:[%s3] sm:$0xf]
  %v628 = vld [vmem:[%s3 + $0x4] sm:$0xf]
  %v629 = vld [vmem:[%s3 + $0x8] sm:$0xf]
  %v630 = vld [vmem:[%s3 + $0xc] sm:$0xf]
  %v631 = vld [vmem:[%s3 + $0x10] sm:$0xf]
  %v632 = vld [vmem:[%s3 + $0x14] sm:$0xf]
  %v633 = vld [vmem:[%s3 + $0x18] sm:$0xf]
  %v634 = vld [vmem:[%s3 + $0x1c] sm:$0xf]
  %v635 = vld [vmem:[%s3 + $0x20] sm:$0xf]
  %v636 = vld [vmem:[%s3 + $0x24] sm:$0xf]
  %v637 = vld [vmem:[%s3 + $0x28] sm:$0xf]
  %v638 = vld [vmem:[%s3 + $0x2c] sm:$0xf]
  %v639 = vld [vmem:[%s3 + $0x30] sm:$0xf]
  %v640 = vld [vmem:[%s3 + $0x34] sm:$0xf]
  %v641 = vld [vmem:[%s3 + $0x38] sm:$0xf]
  %v642 = vld [vmem:[%s3 + $0x3c] sm:$0xf]
  %v643 = vld [vmem:[%s4] sm:$0x1]
  %v645 = vperm.slane %v643, 0
  %v663 = vunpack.c.l.b16 %v627
  %v664 = vunpack.c.l.b16 %v628
  %v665 = vunpack.c.l.b16 %v629
  %v666 = vunpack.c.l.b16 %v630
  %v667 = vunpack.c.l.b16 %v631
  %v668 = vunpack.c.l.b16 %v632
  %v669 = vunpack.c.l.b16 %v633
  %v670 = vunpack.c.l.b16 %v634
  %v671 = vunpack.c.l.b16 %v635
  %v672 = vunpack.c.l.b16 %v636
  %v673 = vunpack.c.l.b16 %v637
  %v674 = vunpack.c.l.b16 %v638
  %v675 = vunpack.c.l.b16 %v639
  %v676 = vunpack.c.l.b16 %v640
  %v677 = vunpack.c.l.b16 %v641
  %v678 = vunpack.c.l.b16 %v642
  %v679 = vpack.c.b16 %v664, %v663
  %v680 = vpack.c.b16 %v666, %v665
  %v681 = vpack.c.b16 %v668, %v667
  %v682 = vpack.c.b16 %v670, %v669
  %v683 = vpack.c.b16 %v672, %v671
  %v684 = vpack.c.b16 %v674, %v673
  %v685 = vpack.c.b16 %v676, %v675
  %v686 = vpack.c.b16 %v678, %v677
  %695 = vmatpush.bf16.msra.mxu0 %v686
  %696 = vmatpush.bf16.msra.mxu0 %v685
  %697 = vmatpush.bf16.msra.mxu0 %v684
  %698 = vmatpush.bf16.msra.mxu0 %v683
  %699 = vmatpush.bf16.msra.mxu0 %v682
  %700 = vmatpush.bf16.msra.mxu0 %v681
  %701 = vmatpush.bf16.msra.mxu0 %v680
  %702 = vmatpush.bf16.msra.mxu0 %v679
  %703 = vmatmul.bf16.gmra.mxu0 %v598
  %v704 = vpop.f32.mrf.mxu0
  %v705 = vadd.f32 %v645, %v704
  %v706 = vpop.f32.mrf.mxu0
  %v707 = vadd.f32 %v645, %v706
  %708 = vmatmul.bf16.gmra.mxu0 %v599
  %v709 = vpop.f32.mrf.mxu0
  %v710 = vadd.f32 %v645, %v709
  %v711 = vpop.f32.mrf.mxu0
  %v712 = vadd.f32 %v645, %v711
  %713 = vmatmul.bf16.gmra.mxu0 %v600
  %v714 = vpop.f32.mrf.mxu0
  %v715 = vadd.f32 %v645, %v714
  %v716 = vpop.f32.mrf.mxu0
  %v717 = vadd.f32 %v645, %v716
  %718 = vmatmul.bf16.gmra.mxu0 %v601
  %v719 = vpop.f32.mrf.mxu0
  %v720 = vadd.f32 %v645, %v719
  %v721 = vpop.f32.mrf.mxu0
  %v722 = vadd.f32 %v645, %v721
  %723 = vmatmul.bf16.gmra.mxu0 %v602
  %v724 = vpop.f32.mrf.mxu0
  %v725 = vadd.f32 %v645, %v724
  %v726 = vpop.f32.mrf.mxu0
  %v727 = vadd.f32 %v645, %v726
  %728 = vmatmul.bf16.gmra.mxu0 %v603
  %v729 = vpop.f32.mrf.mxu0
  %v730 = vadd.f32 %v645, %v729
  %v731 = vpop.f32.mrf.mxu0
  %v732 = vadd.f32 %v645, %v731
  %733 = vmatmul.bf16.gmra.mxu0 %v604
  %v734 = vpop.f32.mrf.mxu0
  %v735 = vadd.f32 %v645, %v734
  %v736 = vpop.f32.mrf.mxu0
  %v737 = vadd.f32 %v645, %v736
  %738 = vmatmul.bf16.gmra.mxu0 %v605
  %v739 = vpop.f32.mrf.mxu0
  %v740 = vadd.f32 %v645, %v739
  %v741 = vpop.f32.mrf.mxu0
  %v742 = vadd.f32 %v645, %v741
  %743 = vmatmul.bf16.gmra.mxu0 %v606
  %v744 = vpop.f32.mrf.mxu0
  %v745 = vadd.f32 %v645, %v744
  %v746 = vpop.f32.mrf.mxu0
  %v747 = vadd.f32 %v645, %v746
  %748 = vmatmul.bf16.gmra.mxu0 %v607
  %v749 = vpop.f32.mrf.mxu0
  %v750 = vadd.f32 %v645, %v749
  %v751 = vpop.f32.mrf.mxu0
  %v752 = vadd.f32 %v645, %v751
  %753 = vmatmul.bf16.gmra.mxu0 %v608
  %v754 = vpop.f32.mrf.mxu0
  %v755 = vadd.f32 %v645, %v754
  %v756 = vpop.f32.mrf.mxu0
  %v757 = vadd.f32 %v645, %v756
  %758 = vmatmul.bf16.gmra.mxu0 %v609
  %v759 = vpop.f32.mrf.mxu0
  %v760 = vadd.f32 %v645, %v759
  %v761 = vpop.f32.mrf.mxu0
  %v762 = vadd.f32 %v645, %v761
  %763 = vmatmul.bf16.gmra.mxu0 %v610
  %v764 = vpop.f32.mrf.mxu0
  %v765 = vadd.f32 %v645, %v764
  %v766 = vpop.f32.mrf.mxu0
  %v767 = vadd.f32 %v645, %v766
  %768 = vmatmul.bf16.gmra.mxu0 %v611
  %v769 = vpop.f32.mrf.mxu0
  %v770 = vadd.f32 %v645, %v769
  %v771 = vpop.f32.mrf.mxu0
  %v772 = vadd.f32 %v645, %v771
  %773 = vmatmul.bf16.gmra.mxu0 %v612
  %v774 = vpop.f32.mrf.mxu0
  %v775 = vadd.f32 %v645, %v774
  %v776 = vpop.f32.mrf.mxu0
  %v777 = vadd.f32 %v645, %v776
  %778 = vmatmul.bf16.gmra.mxu0 %v613
  %v779 = vpop.f32.mrf.mxu0
  %v780 = vadd.f32 %v645, %v779
  %v781 = vpop.f32.mrf.mxu0
  %v782 = vadd.f32 %v645, %v781
  %783 = vmatmul.bf16.gmra.mxu0 %v614
  %v784 = vpop.f32.mrf.mxu0
  %v785 = vadd.f32 %v645, %v784
  %v786 = vpop.f32.mrf.mxu0
  %v787 = vadd.f32 %v645, %v786
  %788 = vmatmul.bf16.gmra.mxu0 %v615
  %v789 = vpop.f32.mrf.mxu0
  %v790 = vadd.f32 %v645, %v789
  %v791 = vpop.f32.mrf.mxu0
  %v792 = vadd.f32 %v645, %v791
  %793 = vmatmul.bf16.gmra.mxu0 %v616
  %v794 = vpop.f32.mrf.mxu0
  %v795 = vadd.f32 %v645, %v794
  %v796 = vpop.f32.mrf.mxu0
  %v797 = vadd.f32 %v645, %v796
  %798 = vmatmul.bf16.gmra.mxu0 %v617
  %v799 = vpop.f32.mrf.mxu0
  %v800 = vadd.f32 %v645, %v799
  %v801 = vpop.f32.mrf.mxu0
  %v802 = vadd.f32 %v645, %v801
  %803 = vmatmul.bf16.gmra.mxu0 %v618
  %v804 = vpop.f32.mrf.mxu0
  %v805 = vadd.f32 %v645, %v804
  %v806 = vpop.f32.mrf.mxu0
  %v807 = vadd.f32 %v645, %v806
  %808 = vmatmul.bf16.gmra.mxu0 %v619
  %v809 = vpop.f32.mrf.mxu0
  %v810 = vadd.f32 %v645, %v809
  %v811 = vpop.f32.mrf.mxu0
  %v812 = vadd.f32 %v645, %v811
  %813 = vmatmul.bf16.gmra.mxu0 %v620
  %v814 = vpop.f32.mrf.mxu0
  %v815 = vadd.f32 %v645, %v814
  %v816 = vpop.f32.mrf.mxu0
  %v817 = vadd.f32 %v645, %v816
  %818 = vmatmul.bf16.gmra.mxu0 %v621
  %v819 = vpop.f32.mrf.mxu0
  %v820 = vadd.f32 %v645, %v819
  %v821 = vpop.f32.mrf.mxu0
  %v822 = vadd.f32 %v645, %v821
  %823 = vmatmul.bf16.gmra.mxu0 %v622
  %v824 = vpop.f32.mrf.mxu0
  %v825 = vadd.f32 %v645, %v824
  %v826 = vpop.f32.mrf.mxu0
  %v827 = vadd.f32 %v645, %v826
  %828 = vmatmul.bf16.gmra.mxu0 %v623
  %v829 = vpop.f32.mrf.mxu0
  %v830 = vadd.f32 %v645, %v829
  %v831 = vpop.f32.mrf.mxu0
  %v832 = vadd.f32 %v645, %v831
  %833 = vmatmul.bf16.gmra.mxu0 %v624
  %v834 = vpop.f32.mrf.mxu0
  %v835 = vadd.f32 %v645, %v834
  %v836 = vpop.f32.mrf.mxu0
  %v837 = vadd.f32 %v645, %v836
  %838 = vmatmul.bf16.gmra.mxu0 %v625
  %v839 = vpop.f32.mrf.mxu0
  %v840 = vadd.f32 %v645, %v839
  %v841 = vpop.f32.mrf.mxu0
  %v842 = vadd.f32 %v645, %v841
  %843 = vmatmul.bf16.gmra.mxu0 %v626
  %v844 = vpop.f32.mrf.mxu0
  %v845 = vadd.f32 %v645, %v844
  %v846 = vpop.f32.mrf.mxu0
  %847 = vdwg.mxu0
  %v848 = vmax.f32 %v705, 0.0
  %v849 = vmax.f32 %v707, 0.0
  %v850 = vmax.f32 %v710, 0.0
  %v851 = vmax.f32 %v712, 0.0
  %v852 = vmax.f32 %v715, 0.0
  %v853 = vmax.f32 %v717, 0.0
  %v854 = vmax.f32 %v720, 0.0
  %v855 = vmax.f32 %v722, 0.0
  %v856 = vmax.f32 %v725, 0.0
  %v857 = vmax.f32 %v727, 0.0
  %v858 = vmax.f32 %v730, 0.0
  %v859 = vmax.f32 %v732, 0.0
  %v860 = vmax.f32 %v735, 0.0
  %v861 = vmax.f32 %v737, 0.0
  %v862 = vmax.f32 %v740, 0.0
  %v863 = vmax.f32 %v742, 0.0
  %v864 = vmax.f32 %v745, 0.0
  %v865 = vmax.f32 %v747, 0.0
  %v866 = vmax.f32 %v750, 0.0
  %v867 = vmax.f32 %v752, 0.0
  %v868 = vmax.f32 %v755, 0.0
  %v869 = vmax.f32 %v757, 0.0
  %v870 = vmax.f32 %v760, 0.0
  %v871 = vmax.f32 %v762, 0.0
  %v872 = vmax.f32 %v765, 0.0
  %v873 = vmax.f32 %v767, 0.0
  %v874 = vmax.f32 %v770, 0.0
  %v875 = vmax.f32 %v772, 0.0
  %v876 = vmax.f32 %v775, 0.0
  %v877 = vmax.f32 %v777, 0.0
  %v878 = vmax.f32 %v780, 0.0
  %v879 = vmax.f32 %v782, 0.0
  %v880 = vmax.f32 %v785, 0.0
  %v881 = vmax.f32 %v787, 0.0
  %v882 = vmax.f32 %v790, 0.0
  %v883 = vmax.f32 %v792, 0.0
  %v884 = vmax.f32 %v795, 0.0
  %v885 = vmax.f32 %v797, 0.0
  %v886 = vmax.f32 %v800, 0.0
  %v887 = vmax.f32 %v802, 0.0
  %v888 = vmax.f32 %v805, 0.0
  %v889 = vmax.f32 %v807, 0.0
  %v890 = vmax.f32 %v810, 0.0
  %v891 = vmax.f32 %v812, 0.0
  %v892 = vmax.f32 %v815, 0.0
  %v893 = vmax.f32 %v817, 0.0
  %v894 = vmax.f32 %v820, 0.0
  %v895 = vmax.f32 %v822, 0.0
  %v896 = vmax.f32 %v825, 0.0
  %v897 = vmax.f32 %v827, 0.0
  %v898 = vmax.f32 %v830, 0.0
  %v899 = vmax.f32 %v832, 0.0
  %v900 = vmax.f32 %v835, 0.0
  %v901 = vmax.f32 %v837, 0.0
  %v902 = vmax.f32 %v840, 0.0
  %v903 = vmax.f32 %v842, 0.0
  %v904 = vmax.f32 %v845, 0.0
  %v905 = vpack.c.bf16 %v849, %v848
  %v906 = vpack.c.bf16 %v851, %v850
  %v907 = vpack.c.bf16 %v853, %v852
  %v908 = vpack.c.bf16 %v855, %v854
  %v909 = vpack.c.bf16 %v857, %v856
  %v910 = vpack.c.bf16 %v859, %v858
  %v911 = vpack.c.bf16 %v861, %v860
  %v912 = vpack.c.bf16 %v863, %v862
  %v913 = vpack.c.bf16 %v865, %v864
  %v914 = vpack.c.bf16 %v867, %v866
  %v915 = vpack.c.bf16 %v869, %v868
  %v916 = vpack.c.bf16 %v871, %v870
  %v917 = vpack.c.bf16 %v873, %v872
  %v918 = vpack.c.bf16 %v875, %v874
  %v919 = vpack.c.bf16 %v877, %v876
  %v920 = vpack.c.bf16 %v879, %v878
  %v921 = vpack.c.bf16 %v881, %v880
  %v922 = vpack.c.bf16 %v883, %v882
  %v923 = vpack.c.bf16 %v885, %v884
  %v924 = vpack.c.bf16 %v887, %v886
  %v925 = vpack.c.bf16 %v889, %v888
  %v926 = vpack.c.bf16 %v891, %v890
  %v927 = vpack.c.bf16 %v893, %v892
  %v928 = vpack.c.bf16 %v895, %v894
  %v929 = vpack.c.bf16 %v897, %v896
  %v930 = vpack.c.bf16 %v899, %v898
  %v931 = vpack.c.bf16 %v901, %v900
  %v932 = vpack.c.bf16 %v903, %v902
  %v933 = vpack.c.bf16 %v904, %v904
  %v934 = vld [vmem:[%s5] sm:$0xf]
  %v935 = vld [vmem:[%s5 + $0x4] sm:$0xf]
  %v936 = vld [vmem:[%s5 + $0x8] sm:$0xf]
  %v937 = vld [vmem:[%s5 + $0xc] sm:$0xf]
  %v938 = vld [vmem:[%s5 + $0x10] sm:$0xf]
  %v939 = vld [vmem:[%s5 + $0x14] sm:$0xf]
  %v940 = vld [vmem:[%s5 + $0x18] sm:$0xf]
  %v941 = vld [vmem:[%s5 + $0x1c] sm:$0xf]
  %v942 = vld [vmem:[%s5 + $0x20] sm:$0xf]
  %v943 = vld [vmem:[%s5 + $0x24] sm:$0xf]
  %v944 = vld [vmem:[%s5 + $0x28] sm:$0xf]
  %v945 = vld [vmem:[%s5 + $0x2c] sm:$0xf]
  %v946 = vld [vmem:[%s5 + $0x30] sm:$0xf]
  %v947 = vld [vmem:[%s5 + $0x34] sm:$0xf]
  %v948 = vld [vmem:[%s5 + $0x38] sm:$0xf]
  %v949 = vld [vmem:[%s5 + $0x3c] sm:$0xf]
  %v950 = vld [vmem:[%s6] sm:$0x1]
  %v952 = vperm.slane %v950, 0
  %v970 = vunpack.c.l.b16 %v934
  %v971 = vunpack.c.l.b16 %v935
  %v972 = vunpack.c.l.b16 %v936
  %v973 = vunpack.c.l.b16 %v937
  %v974 = vunpack.c.l.b16 %v938
  %v975 = vunpack.c.l.b16 %v939
  %v976 = vunpack.c.l.b16 %v940
  %v977 = vunpack.c.l.b16 %v941
  %v978 = vunpack.c.l.b16 %v942
  %v979 = vunpack.c.l.b16 %v943
  %v980 = vunpack.c.l.b16 %v944
  %v981 = vunpack.c.l.b16 %v945
  %v982 = vunpack.c.l.b16 %v946
  %v983 = vunpack.c.l.b16 %v947
  %v984 = vunpack.c.l.b16 %v948
  %v985 = vunpack.c.l.b16 %v949
  %v986 = vpack.c.b16 %v971, %v970
  %v987 = vpack.c.b16 %v973, %v972
  %v988 = vpack.c.b16 %v975, %v974
  %v989 = vpack.c.b16 %v977, %v976
  %v990 = vpack.c.b16 %v979, %v978
  %v991 = vpack.c.b16 %v981, %v980
  %v992 = vpack.c.b16 %v983, %v982
  %v993 = vpack.c.b16 %v985, %v984
  %1002 = vmatpush.bf16.msra.mxu0 %v993
  %1003 = vmatpush.bf16.msra.mxu0 %v992
  %1004 = vmatpush.bf16.msra.mxu0 %v991
  %1005 = vmatpush.bf16.msra.mxu0 %v990
  %1006 = vmatpush.bf16.msra.mxu0 %v989
  %1007 = vmatpush.bf16.msra.mxu0 %v988
  %1008 = vmatpush.bf16.msra.mxu0 %v987
  %1009 = vmatpush.bf16.msra.mxu0 %v986
  %1010 = vmatmul.bf16.gmra.mxu0 %v905
  %v1011 = vpop.f32.mrf.mxu0
  %v1012 = vadd.f32 %v952, %v1011
  %v1013 = vpop.f32.mrf.mxu0
  %v1014 = vadd.f32 %v952, %v1013
  %1015 = vmatmul.bf16.gmra.mxu0 %v906
  %v1016 = vpop.f32.mrf.mxu0
  %v1017 = vadd.f32 %v952, %v1016
  %v1018 = vpop.f32.mrf.mxu0
  %v1019 = vadd.f32 %v952, %v1018
  %1020 = vmatmul.bf16.gmra.mxu0 %v907
  %v1021 = vpop.f32.mrf.mxu0
  %v1022 = vadd.f32 %v952, %v1021
  %v1023 = vpop.f32.mrf.mxu0
  %v1024 = vadd.f32 %v952, %v1023
  %1025 = vmatmul.bf16.gmra.mxu0 %v908
  %v1026 = vpop.f32.mrf.mxu0
  %v1027 = vadd.f32 %v952, %v1026
  %v1028 = vpop.f32.mrf.mxu0
  %v1029 = vadd.f32 %v952, %v1028
  %1030 = vmatmul.bf16.gmra.mxu0 %v909
  %v1031 = vpop.f32.mrf.mxu0
  %v1032 = vadd.f32 %v952, %v1031
  %v1033 = vpop.f32.mrf.mxu0
  %v1034 = vadd.f32 %v952, %v1033
  %1035 = vmatmul.bf16.gmra.mxu0 %v910
  %v1036 = vpop.f32.mrf.mxu0
  %v1037 = vadd.f32 %v952, %v1036
  %v1038 = vpop.f32.mrf.mxu0
  %v1039 = vadd.f32 %v952, %v1038
  %1040 = vmatmul.bf16.gmra.mxu0 %v911
  %v1041 = vpop.f32.mrf.mxu0
  %v1042 = vadd.f32 %v952, %v1041
  %v1043 = vpop.f32.mrf.mxu0
  %v1044 = vadd.f32 %v952, %v1043
  %1045 = vmatmul.bf16.gmra.mxu0 %v912
  %v1046 = vpop.f32.mrf.mxu0
  %v1047 = vadd.f32 %v952, %v1046
  %v1048 = vpop.f32.mrf.mxu0
  %v1049 = vadd.f32 %v952, %v1048
  %1050 = vmatmul.bf16.gmra.mxu0 %v913
  %v1051 = vpop.f32.mrf.mxu0
  %v1052 = vadd.f32 %v952, %v1051
  %v1053 = vpop.f32.mrf.mxu0
  %v1054 = vadd.f32 %v952, %v1053
  %1055 = vmatmul.bf16.gmra.mxu0 %v914
  %v1056 = vpop.f32.mrf.mxu0
  %v1057 = vadd.f32 %v952, %v1056
  %v1058 = vpop.f32.mrf.mxu0
  %v1059 = vadd.f32 %v952, %v1058
  %1060 = vmatmul.bf16.gmra.mxu0 %v915
  %v1061 = vpop.f32.mrf.mxu0
  %v1062 = vadd.f32 %v952, %v1061
  %v1063 = vpop.f32.mrf.mxu0
  %v1064 = vadd.f32 %v952, %v1063
  %1065 = vmatmul.bf16.gmra.mxu0 %v916
  %v1066 = vpop.f32.mrf.mxu0
  %v1067 = vadd.f32 %v952, %v1066
  %v1068 = vpop.f32.mrf.mxu0
  %v1069 = vadd.f32 %v952, %v1068
  %1070 = vmatmul.bf16.gmra.mxu0 %v917
  %v1071 = vpop.f32.mrf.mxu0
  %v1072 = vadd.f32 %v952, %v1071
  %v1073 = vpop.f32.mrf.mxu0
  %v1074 = vadd.f32 %v952, %v1073
  %1075 = vmatmul.bf16.gmra.mxu0 %v918
  %v1076 = vpop.f32.mrf.mxu0
  %v1077 = vadd.f32 %v952, %v1076
  %v1078 = vpop.f32.mrf.mxu0
  %v1079 = vadd.f32 %v952, %v1078
  %1080 = vmatmul.bf16.gmra.mxu0 %v919
  %v1081 = vpop.f32.mrf.mxu0
  %v1082 = vadd.f32 %v952, %v1081
  %v1083 = vpop.f32.mrf.mxu0
  %v1084 = vadd.f32 %v952, %v1083
  %1085 = vmatmul.bf16.gmra.mxu0 %v920
  %v1086 = vpop.f32.mrf.mxu0
  %v1087 = vadd.f32 %v952, %v1086
  %v1088 = vpop.f32.mrf.mxu0
  %v1089 = vadd.f32 %v952, %v1088
  %1090 = vmatmul.bf16.gmra.mxu0 %v921
  %v1091 = vpop.f32.mrf.mxu0
  %v1092 = vadd.f32 %v952, %v1091
  %v1093 = vpop.f32.mrf.mxu0
  %v1094 = vadd.f32 %v952, %v1093
  %1095 = vmatmul.bf16.gmra.mxu0 %v922
  %v1096 = vpop.f32.mrf.mxu0
  %v1097 = vadd.f32 %v952, %v1096
  %v1098 = vpop.f32.mrf.mxu0
  %v1099 = vadd.f32 %v952, %v1098
  %1100 = vmatmul.bf16.gmra.mxu0 %v923
  %v1101 = vpop.f32.mrf.mxu0
  %v1102 = vadd.f32 %v952, %v1101
  %v1103 = vpop.f32.mrf.mxu0
  %v1104 = vadd.f32 %v952, %v1103
  %1105 = vmatmul.bf16.gmra.mxu0 %v924
  %v1106 = vpop.f32.mrf.mxu0
  %v1107 = vadd.f32 %v952, %v1106
  %v1108 = vpop.f32.mrf.mxu0
  %v1109 = vadd.f32 %v952, %v1108
  %1110 = vmatmul.bf16.gmra.mxu0 %v925
  %v1111 = vpop.f32.mrf.mxu0
  %v1112 = vadd.f32 %v952, %v1111
  %v1113 = vpop.f32.mrf.mxu0
  %v1114 = vadd.f32 %v952, %v1113
  %1115 = vmatmul.bf16.gmra.mxu0 %v926
  %v1116 = vpop.f32.mrf.mxu0
  %v1117 = vadd.f32 %v952, %v1116
  %v1118 = vpop.f32.mrf.mxu0
  %v1119 = vadd.f32 %v952, %v1118
  %1120 = vmatmul.bf16.gmra.mxu0 %v927
  %v1121 = vpop.f32.mrf.mxu0
  %v1122 = vadd.f32 %v952, %v1121
  %v1123 = vpop.f32.mrf.mxu0
  %v1124 = vadd.f32 %v952, %v1123
  %1125 = vmatmul.bf16.gmra.mxu0 %v928
  %v1126 = vpop.f32.mrf.mxu0
  %v1127 = vadd.f32 %v952, %v1126
  %v1128 = vpop.f32.mrf.mxu0
  %v1129 = vadd.f32 %v952, %v1128
  %1130 = vmatmul.bf16.gmra.mxu0 %v929
  %v1131 = vpop.f32.mrf.mxu0
  %v1132 = vadd.f32 %v952, %v1131
  %v1133 = vpop.f32.mrf.mxu0
  %v1134 = vadd.f32 %v952, %v1133
  %1135 = vmatmul.bf16.gmra.mxu0 %v930
  %v1136 = vpop.f32.mrf.mxu0
  %v1137 = vadd.f32 %v952, %v1136
  %v1138 = vpop.f32.mrf.mxu0
  %v1139 = vadd.f32 %v952, %v1138
  %1140 = vmatmul.bf16.gmra.mxu0 %v931
  %v1141 = vpop.f32.mrf.mxu0
  %v1142 = vadd.f32 %v952, %v1141
  %v1143 = vpop.f32.mrf.mxu0
  %v1144 = vadd.f32 %v952, %v1143
  %1145 = vmatmul.bf16.gmra.mxu0 %v932
  %v1146 = vpop.f32.mrf.mxu0
  %v1147 = vadd.f32 %v952, %v1146
  %v1148 = vpop.f32.mrf.mxu0
  %v1149 = vadd.f32 %v952, %v1148
  %1150 = vmatmul.bf16.gmra.mxu0 %v933
  %v1151 = vpop.f32.mrf.mxu0
  %v1152 = vadd.f32 %v952, %v1151
  %v1153 = vpop.f32.mrf.mxu0
  %1154 = vdwg.mxu0
  %v1155 = vmax.f32 %v1012, 0.0
  %v1156 = vmax.f32 %v1014, 0.0
  %v1157 = vmax.f32 %v1017, 0.0
  %v1158 = vmax.f32 %v1019, 0.0
  %v1159 = vmax.f32 %v1022, 0.0
  %v1160 = vmax.f32 %v1024, 0.0
  %v1161 = vmax.f32 %v1027, 0.0
  %v1162 = vmax.f32 %v1029, 0.0
  %v1163 = vmax.f32 %v1032, 0.0
  %v1164 = vmax.f32 %v1034, 0.0
  %v1165 = vmax.f32 %v1037, 0.0
  %v1166 = vmax.f32 %v1039, 0.0
  %v1167 = vmax.f32 %v1042, 0.0
  %v1168 = vmax.f32 %v1044, 0.0
  %v1169 = vmax.f32 %v1047, 0.0
  %v1170 = vmax.f32 %v1049, 0.0
  %v1171 = vmax.f32 %v1052, 0.0
  %v1172 = vmax.f32 %v1054, 0.0
  %v1173 = vmax.f32 %v1057, 0.0
  %v1174 = vmax.f32 %v1059, 0.0
  %v1175 = vmax.f32 %v1062, 0.0
  %v1176 = vmax.f32 %v1064, 0.0
  %v1177 = vmax.f32 %v1067, 0.0
  %v1178 = vmax.f32 %v1069, 0.0
  %v1179 = vmax.f32 %v1072, 0.0
  %v1180 = vmax.f32 %v1074, 0.0
  %v1181 = vmax.f32 %v1077, 0.0
  %v1182 = vmax.f32 %v1079, 0.0
  %v1183 = vmax.f32 %v1082, 0.0
  %v1184 = vmax.f32 %v1084, 0.0
  %v1185 = vmax.f32 %v1087, 0.0
  %v1186 = vmax.f32 %v1089, 0.0
  %v1187 = vmax.f32 %v1092, 0.0
  %v1188 = vmax.f32 %v1094, 0.0
  %v1189 = vmax.f32 %v1097, 0.0
  %v1190 = vmax.f32 %v1099, 0.0
  %v1191 = vmax.f32 %v1102, 0.0
  %v1192 = vmax.f32 %v1104, 0.0
  %v1193 = vmax.f32 %v1107, 0.0
  %v1194 = vmax.f32 %v1109, 0.0
  %v1195 = vmax.f32 %v1112, 0.0
  %v1196 = vmax.f32 %v1114, 0.0
  %v1197 = vmax.f32 %v1117, 0.0
  %v1198 = vmax.f32 %v1119, 0.0
  %v1199 = vmax.f32 %v1122, 0.0
  %v1200 = vmax.f32 %v1124, 0.0
  %v1201 = vmax.f32 %v1127, 0.0
  %v1202 = vmax.f32 %v1129, 0.0
  %v1203 = vmax.f32 %v1132, 0.0
  %v1204 = vmax.f32 %v1134, 0.0
  %v1205 = vmax.f32 %v1137, 0.0
  %v1206 = vmax.f32 %v1139, 0.0
  %v1207 = vmax.f32 %v1142, 0.0
  %v1208 = vmax.f32 %v1144, 0.0
  %v1209 = vmax.f32 %v1147, 0.0
  %v1210 = vmax.f32 %v1149, 0.0
  %v1211 = vmax.f32 %v1152, 0.0
  %v1212 = vpack.c.bf16 %v1155, %v1155
  %v1213 = vpack.c.bf16 %v1156, %v1156
  %v1214 = vpack.c.bf16 %v1157, %v1157
  %v1215 = vpack.c.bf16 %v1158, %v1158
  %v1216 = vpack.c.bf16 %v1159, %v1159
  %v1217 = vpack.c.bf16 %v1160, %v1160
  %v1218 = vpack.c.bf16 %v1161, %v1161
  %v1219 = vpack.c.bf16 %v1162, %v1162
  %v1220 = vpack.c.bf16 %v1163, %v1163
  %v1221 = vpack.c.bf16 %v1164, %v1164
  %v1222 = vpack.c.bf16 %v1165, %v1165
  %v1223 = vpack.c.bf16 %v1166, %v1166
  %v1224 = vpack.c.bf16 %v1167, %v1167
  %v1225 = vpack.c.bf16 %v1168, %v1168
  %v1226 = vpack.c.bf16 %v1169, %v1169
  %v1227 = vpack.c.bf16 %v1170, %v1170
  %v1228 = vpack.c.bf16 %v1171, %v1171
  %v1229 = vpack.c.bf16 %v1172, %v1172
  %v1230 = vpack.c.bf16 %v1173, %v1173
  %v1231 = vpack.c.bf16 %v1174, %v1174
  %v1232 = vpack.c.bf16 %v1175, %v1175
  %v1233 = vpack.c.bf16 %v1176, %v1176
  %v1234 = vpack.c.bf16 %v1177, %v1177
  %v1235 = vpack.c.bf16 %v1178, %v1178
  %v1236 = vpack.c.bf16 %v1179, %v1179
  %v1237 = vpack.c.bf16 %v1180, %v1180
  %v1238 = vpack.c.bf16 %v1181, %v1181
  %v1239 = vpack.c.bf16 %v1182, %v1182
  %v1240 = vpack.c.bf16 %v1183, %v1183
  %v1241 = vpack.c.bf16 %v1184, %v1184
  %v1242 = vpack.c.bf16 %v1185, %v1185
  %v1243 = vpack.c.bf16 %v1186, %v1186
  %v1244 = vpack.c.bf16 %v1187, %v1187
  %v1245 = vpack.c.bf16 %v1188, %v1188
  %v1246 = vpack.c.bf16 %v1189, %v1189
  %v1247 = vpack.c.bf16 %v1190, %v1190
  %v1248 = vpack.c.bf16 %v1191, %v1191
  %v1249 = vpack.c.bf16 %v1192, %v1192
  %v1250 = vpack.c.bf16 %v1193, %v1193
  %v1251 = vpack.c.bf16 %v1194, %v1194
  %v1252 = vpack.c.bf16 %v1195, %v1195
  %v1253 = vpack.c.bf16 %v1196, %v1196
  %v1254 = vpack.c.bf16 %v1197, %v1197
  %v1255 = vpack.c.bf16 %v1198, %v1198
  %v1256 = vpack.c.bf16 %v1199, %v1199
  %v1257 = vpack.c.bf16 %v1200, %v1200
  %v1258 = vpack.c.bf16 %v1201, %v1201
  %v1259 = vpack.c.bf16 %v1202, %v1202
  %v1260 = vpack.c.bf16 %v1203, %v1203
  %v1261 = vpack.c.bf16 %v1204, %v1204
  %v1262 = vpack.c.bf16 %v1205, %v1205
  %v1263 = vpack.c.bf16 %v1206, %v1206
  %v1264 = vpack.c.bf16 %v1207, %v1207
  %v1265 = vpack.c.bf16 %v1208, %v1208
  %v1266 = vpack.c.bf16 %v1209, %v1209
  %v1267 = vpack.c.bf16 %v1210, %v1210
  %v1268 = vpack.c.bf16 %v1211, %v1211
  %1269 = vst [vmem:[%s7] sm:$0xf] %v1212
  %1270 = vst [vmem:[%s7 + $0x4] sm:$0xf] %v1213
  %1271 = vst [vmem:[%s7 + $0x8] sm:$0xf] %v1214
  %1272 = vst [vmem:[%s7 + $0xc] sm:$0xf] %v1215
  %1273 = vst [vmem:[%s7 + $0x10] sm:$0xf] %v1216
  %1274 = vst [vmem:[%s7 + $0x14] sm:$0xf] %v1217
  %1275 = vst [vmem:[%s7 + $0x18] sm:$0xf] %v1218
  %1276 = vst [vmem:[%s7 + $0x1c] sm:$0xf] %v1219
  %1277 = vst [vmem:[%s7 + $0x20] sm:$0xf] %v1220
  %1278 = vst [vmem:[%s7 + $0x24] sm:$0xf] %v1221
  %1279 = vst [vmem:[%s7 + $0x28] sm:$0xf] %v1222
  %1280 = vst [vmem:[%s7 + $0x2c] sm:$0xf] %v1223
  %1281 = vst [vmem:[%s7 + $0x30] sm:$0xf] %v1224
  %1282 = vst [vmem:[%s7 + $0x34] sm:$0xf] %v1225
  %1283 = vst [vmem:[%s7 + $0x38] sm:$0xf] %v1226
  %1284 = vst [vmem:[%s7 + $0x3c] sm:$0xf] %v1227
  %1285 = vst [vmem:[%s7 + $0x40] sm:$0xf] %v1228
  %1286 = vst [vmem:[%s7 + $0x44] sm:$0xf] %v1229
  %1287 = vst [vmem:[%s7 + $0x48] sm:$0xf] %v1230
  %1288 = vst [vmem:[%s7 + $0x4c] sm:$0xf] %v1231
  %1289 = vst [vmem:[%s7 + $0x50] sm:$0xf] %v1232
  %1290 = vst [vmem:[%s7 + $0x54] sm:$0xf] %v1233
  %1291 = vst [vmem:[%s7 + $0x58] sm:$0xf] %v1234
  %1292 = vst [vmem:[%s7 + $0x5c] sm:$0xf] %v1235
  %1293 = vst [vmem:[%s7 + $0x60] sm:$0xf] %v1236
  %1294 = vst [vmem:[%s7 + $0x64] sm:$0xf] %v1237
  %1295 = vst [vmem:[%s7 + $0x68] sm:$0xf] %v1238
  %1296 = vst [vmem:[%s7 + $0x6c] sm:$0xf] %v1239
  %1297 = vst [vmem:[%s7 + $0x70] sm:$0xf] %v1240
  %1298 = vst [vmem:[%s7 + $0x74] sm:$0xf] %v1241
  %1299 = vst [vmem:[%s7 + $0x78] sm:$0xf] %v1242
  %1300 = vst [vmem:[%s7 + $0x7c] sm:$0xf] %v1243
  %1301 = vst [vmem:[%s7 + $0x80] sm:$0xf] %v1244
  %1302 = vst [vmem:[%s7 + $0x84] sm:$0xf] %v1245
  %1303 = vst [vmem:[%s7 + $0x88] sm:$0xf] %v1246
  %1304 = vst [vmem:[%s7 + $0x8c] sm:$0xf] %v1247
  %1305 = vst [vmem:[%s7 + $0x90] sm:$0xf] %v1248
  %1306 = vst [vmem:[%s7 + $0x94] sm:$0xf] %v1249
  %1307 = vst [vmem:[%s7 + $0x98] sm:$0xf] %v1250
  %1308 = vst [vmem:[%s7 + $0x9c] sm:$0xf] %v1251
  %1309 = vst [vmem:[%s7 + $0xa0] sm:$0xf] %v1252
  %1310 = vst [vmem:[%s7 + $0xa4] sm:$0xf] %v1253
  %1311 = vst [vmem:[%s7 + $0xa8] sm:$0xf] %v1254
  %1312 = vst [vmem:[%s7 + $0xac] sm:$0xf] %v1255
  %1313 = vst [vmem:[%s7 + $0xb0] sm:$0xf] %v1256
  %1314 = vst [vmem:[%s7 + $0xb4] sm:$0xf] %v1257
  %1315 = vst [vmem:[%s7 + $0xb8] sm:$0xf] %v1258
  %1316 = vst [vmem:[%s7 + $0xbc] sm:$0xf] %v1259
  %1317 = vst [vmem:[%s7 + $0xc0] sm:$0xf] %v1260
  %1318 = vst [vmem:[%s7 + $0xc4] sm:$0xf] %v1261
  %1319 = vst [vmem:[%s7 + $0xc8] sm:$0xf] %v1262
  %1320 = vst [vmem:[%s7 + $0xcc] sm:$0xf] %v1263
  %1321 = vst [vmem:[%s7 + $0xd0] sm:$0xf] %v1264
  %1322 = vst [vmem:[%s7 + $0xd4] sm:$0xf] %v1265
  %1323 = vst [vmem:[%s7 + $0xd8] sm:$0xf] %v1266
  %1324 = vst [vmem:[%s7 + $0xdc] sm:$0xf] %v1267
  %1325 = vst [vmem:[%s7 + $0xe0] sm:$0xf] %v1268
  // Predicated region
  $region30: #{net_forward.4} parent=0 // pred_check
    _
  $region31: #{net_forward.4} parent=0 // pred_check_branch
    %1327 = sbr.rel (0) target = $region33
  $region32: #{net_forward.4} parent=0 // pred_region
    _
  $region33: #{net_forward.4} parent=0 // pred_fallthru
    _
  // Predicated region
  $region34: #{net_forward.4} parent=0 // pred_check
    _
  $region35: #{net_forward.4} parent=0 // pred_check_branch
    %1329 = sbr.rel (0) target = $region37
  $region36: #{net_forward.4} parent=0 // pred_region
    _
  $region37: #{net_forward.4} parent=0 // pred_fallthru
    _

// kernel: net_forward.7
$region0: #{net_forward.7}
  #allocation0 [shape = 'u32[]', space=smem, size = 0x4, offset = 0x4, fixed_abs, tag = 'smem constant byte address 0x4 - core index']
  #allocation1 [shape = 'u32[72,128]{1,0:T(1,128)}', space=vmem, size = 0x9000, scoped, tag = 'internal scratch']
  %s0 = inlined_call_operand.vmem [shape: bf16[8,3456], index: 0, kind: input, shape index: {}]
  %s1 = inlined_call_operand.vmem [shape: bf16[3456,128], index: 1, kind: input, shape index: {}]
  %s2 = inlined_call_operand.vmem [shape: f32[1,128], index: 2, kind: input, shape index: {}]
  %s3 = inlined_call_operand.vmem [shape: bf16[128,128], index: 3, kind: input, shape index: {}]
  %s4 = inlined_call_operand.vmem [shape: f32[1,128], index: 4, kind: input, shape index: {}]
  %s5 = inlined_call_operand.vmem [shape: bf16[128,128], index: 5, kind: input, shape index: {}]
  %s6 = inlined_call_operand.vmem [shape: f32[1,128], index: 6, kind: input, shape index: {}]
  %s7 = inlined_call_operand.vmem [shape: bf16[8,128], index: 7, kind: output, shape index: {}]
  %s8 = sld [smem:[#allocation0]]
  $region38: #{net_forward.7} parent=0
    _
  %s10 = ssub.s32 1, %s8
  %s11 = scalar_select 0, %s10, %s8
  // Predicated region
  $region2: #{net_forward.7} parent=0 // pred_check
    _
  $region3: #{net_forward.7} parent=0 // pred_check_branch
    %13 = sbr.rel (0) target = $region5
  $region4: #{net_forward.7} parent=0 // pred_region
    _
  $region5: #{net_forward.7} parent=0 // pred_fallthru
    _
  // Predicated region
  $region6: #{net_forward.7} parent=0 // pred_check
    _
  $region7: #{net_forward.7} parent=0 // pred_check_branch
    %15 = sbr.rel (0) target = $region9
  $region8: #{net_forward.7} parent=0 // pred_region
    _
  $region9: #{net_forward.7} parent=0 // pred_fallthru
    _
  // Predicated region
  $region10: #{net_forward.7} parent=0 // pred_check
    _
  $region11: #{net_forward.7} parent=0 // pred_check_branch
    %17 = sbr.rel (0) target = $region13
  $region12: #{net_forward.7} parent=0 // pred_region
    _
  $region13: #{net_forward.7} parent=0 // pred_fallthru
    _
  // Predicated region
  $region14: #{net_forward.7} parent=0 // pred_check
    _
  $region15: #{net_forward.7} parent=0 // pred_check_branch
    %19 = sbr.rel (0) target = $region17
  $region16: #{net_forward.7} parent=0 // pred_region
    _
  $region17: #{net_forward.7} parent=0 // pred_fallthru
    _
  // Predicated region
  $region18: #{net_forward.7} parent=0 // pred_check
    _
  $region19: #{net_forward.7} parent=0 // pred_check_branch
    %21 = sbr.rel (0) target = $region21
  $region20: #{net_forward.7} parent=0 // pred_region
    _
  $region21: #{net_forward.7} parent=0 // pred_fallthru
    _
  // Predicated region
  $region22: #{net_forward.7} parent=0 // pred_check
    _
  $region23: #{net_forward.7} parent=0 // pred_check_branch
    %23 = sbr.rel (0) target = $region25
  $region24: #{net_forward.7} parent=0 // pred_region
    _
  $region25: #{net_forward.7} parent=0 // pred_fallthru
    _
  // Predicated region
  $region26: #{net_forward.7} parent=0 // pred_check
    _
  $region27: #{net_forward.7} parent=0 // pred_check_branch
    %25 = sbr.rel (0) target = $region29
  $region28: #{net_forward.7} parent=0 // pred_region
    _
  $region29: #{net_forward.7} parent=0 // pred_fallthru
    _
  %v26 = vld [vmem:[%s0] sm:$0xff]
  %v27 = vld [vmem:[%s0 + $0x8] sm:$0xff]
  %v28 = vld [vmem:[%s0 + $0x10] sm:$0xff]
  %v29 = vld [vmem:[%s0 + $0x18] sm:$0xff]
  %v30 = vld [vmem:[%s0 + $0x20] sm:$0xff]
  %v31 = vld [vmem:[%s0 + $0x28] sm:$0xff]
  %v32 = vld [vmem:[%s0 + $0x30] sm:$0xff]
  %v33 = vld [vmem:[%s0 + $0x38] sm:$0xff]
  %v34 = vld [vmem:[%s0 + $0x40] sm:$0xff]
  %v35 = vld [vmem:[%s0 + $0x48] sm:$0xff]
  %v36 = vld [vmem:[%s0 + $0x50] sm:$0xff]
  %v37 = vld [vmem:[%s0 + $0x58] sm:$0xff]
  %v38 = vld [vmem:[%s0 + $0x60] sm:$0xff]
  %v39 = vld [vmem:[%s0 + $0x68] sm:$0xf]
  %v40 = vld [vmem:[%s1] sm:$0xf]
  %v41 = vld [vmem:[%s1 + $0x4] sm:$0xf]
  %v42 = vld [vmem:[%s1 + $0x8] sm:$0xf]
  %v43 = vld [vmem:[%s1 + $0xc] sm:$0xf]
  %v44 = vld [vmem:[%s1 + $0x10] sm:$0xf]
  %v45 = vld [vmem:[%s1 + $0x14] sm:$0xf]
  %v46 = vld [vmem:[%s1 + $0x18] sm:$0xf]
  %v47 = vld [vmem:[%s1 + $0x1c] sm:$0xf]
  %v48 = vld [vmem:[%s1 + $0x20] sm:$0xf]
  %v49 = vld [vmem:[%s1 + $0x24] sm:$0xf]
  %v50 = vld [vmem:[%s1 + $0x28] sm:$0xf]
  %v51 = vld [vmem:[%s1 + $0x2c] sm:$0xf]
  %v52 = vld [vmem:[%s1 + $0x30] sm:$0xf]
  %v53 = vld [vmem:[%s1 + $0x34] sm:$0xf]
  %v54 = vld [vmem:[%s1 + $0x38] sm:$0xf]
  %v55 = vld [vmem:[%s1 + $0x3c] sm:$0xf]
  %v56 = vld [vmem:[%s1 + $0x40] sm:$0xf]
  %v57 = vld [vmem:[%s1 + $0x44] sm:$0xf]
  %v58 = vld [vmem:[%s1 + $0x48] sm:$0xf]
  %v59 = vld [vmem:[%s1 + $0x4c] sm:$0xf]
  %v60 = vld [vmem:[%s1 + $0x50] sm:$0xf]
  %v61 = vld [vmem:[%s1 + $0x54] sm:$0xf]
  %v62 = vld [vmem:[%s1 + $0x58] sm:$0xf]
  %v63 = vld [vmem:[%s1 + $0x5c] sm:$0xf]
  %v64 = vld [vmem:[%s1 + $0x60] sm:$0xf]
  %v65 = vld [vmem:[%s1 + $0x64] sm:$0xf]
  %v66 = vld [vmem:[%s1 + $0x68] sm:$0xf]
  %v67 = vld [vmem:[%s1 + $0x6c] sm:$0xf]
  %v68 = vld [vmem:[%s1 + $0x70] sm:$0xf]
  %v69 = vld [vmem:[%s1 + $0x74] sm:$0xf]
  %v70 = vld [vmem:[%s1 + $0x78] sm:$0xf]
  %v71 = vld [vmem:[%s1 + $0x7c] sm:$0xf]
  %v72 = vld [vmem:[%s1 + $0x80] sm:$0xf]
  %v73 = vld [vmem:[%s1 + $0x84] sm:$0xf]
  %v74 = vld [vmem:[%s1 + $0x88] sm:$0xf]
  %v75 = vld [vmem:[%s1 + $0x8c] sm:$0xf]
  %v76 = vld [vmem:[%s1 + $0x90] sm:$0xf]
  %v77 = vld [vmem:[%s1 + $0x94] sm:$0xf]
  %v78 = vld [vmem:[%s1 + $0x98] sm:$0xf]
  %v79 = vld [vmem:[%s1 + $0x9c] sm:$0xf]
  %v80 = vld [vmem:[%s1 + $0xa0] sm:$0xf]
  %v81 = vld [vmem:[%s1 + $0xa4] sm:$0xf]
  %v82 = vld [vmem:[%s1 + $0xa8] sm:$0xf]
  %v83 = vld [vmem:[%s1 + $0xac] sm:$0xf]
  %v84 = vld [vmem:[%s1 + $0xb0] sm:$0xf]
  %v85 = vld [vmem:[%s1 + $0xb4] sm:$0xf]
  %v86 = vld [vmem:[%s1 + $0xb8] sm:$0xf]
  %v87 = vld [vmem:[%s1 + $0xbc] sm:$0xf]
  %v88 = vld [vmem:[%s1 + $0xc0] sm:$0xf]
  %v89 = vld [vmem:[%s1 + $0xc4] sm:$0xf]
  %v90 = vld [vmem:[%s1 + $0xc8] sm:$0xf]
  %v91 = vld [vmem:[%s1 + $0xcc] sm:$0xf]
  %v92 = vld [vmem:[%s1 + $0xd0] sm:$0xf]
  %v93 = vld [vmem:[%s1 + $0xd4] sm:$0xf]
  %v94 = vld [vmem:[%s1 + $0xd8] sm:$0xf]
  %v95 = vld [vmem:[%s1 + $0xdc] sm:$0xf]
  %v96 = vld [vmem:[%s1 + $0xe0] sm:$0xf]
  %v97 = vld [vmem:[%s1 + $0xe4] sm:$0xf]
  %v98 = vld [vmem:[%s1 + $0xe8] sm:$0xf]
  %v99 = vld [vmem:[%s1 + $0xec] sm:$0xf]
  %v100 = vld [vmem:[%s1 + $0xf0] sm:$0xf]
  %v101 = vld [vmem:[%s1 + $0xf4] sm:$0xf]
  %v102 = vld [vmem:[%s1 + $0xf8] sm:$0xf]
  %v103 = vld [vmem:[%s1 + $0xfc] sm:$0xf]
  %v104 = vld [vmem:[%s1 + $0x100] sm:$0xf]
  %v105 = vld [vmem:[%s1 + $0x104] sm:$0xf]
  %v106 = vld [vmem:[%s1 + $0x108] sm:$0xf]
  %v107 = vld [vmem:[%s1 + $0x10c] sm:$0xf]
  %v108 = vld [vmem:[%s1 + $0x110] sm:$0xf]
  %v109 = vld [vmem:[%s1 + $0x114] sm:$0xf]
  %v110 = vld [vmem:[%s1 + $0x118] sm:$0xf]
  %v111 = vld [vmem:[%s1 + $0x11c] sm:$0xf]
  %v112 = vld [vmem:[%s1 + $0x120] sm:$0xf]
  %v113 = vld [vmem:[%s1 + $0x124] sm:$0xf]
  %v114 = vld [vmem:[%s1 + $0x128] sm:$0xf]
  %v115 = vld [vmem:[%s1 + $0x12c] sm:$0xf]
  %v116 = vld [vmem:[%s1 + $0x130] sm:$0xf]
  %v117 = vld [vmem:[%s1 + $0x134] sm:$0xf]
  %v118 = vld [vmem:[%s1 + $0x138] sm:$0xf]
  %v119 = vld [vmem:[%s1 + $0x13c] sm:$0xf]
  %v120 = vld [vmem:[%s1 + $0x140] sm:$0xf]
  %v121 = vld [vmem:[%s1 + $0x144] sm:$0xf]
  %v122 = vld [vmem:[%s1 + $0x148] sm:$0xf]
  %v123 = vld [vmem:[%s1 + $0x14c] sm:$0xf]
  %v124 = vld [vmem:[%s1 + $0x150] sm:$0xf]
  %v125 = vld [vmem:[%s1 + $0x154] sm:$0xf]
  %v126 = vld [vmem:[%s1 + $0x158] sm:$0xf]
  %v127 = vld [vmem:[%s1 + $0x15c] sm:$0xf]
  %v128 = vld [vmem:[%s1 + $0x160] sm:$0xf]
  %v129 = vld [vmem:[%s1 + $0x164] sm:$0xf]
  %v130 = vld [vmem:[%s1 + $0x168] sm:$0xf]
  %v131 = vld [vmem:[%s1 + $0x16c] sm:$0xf]
  %v132 = vld [vmem:[%s1 + $0x170] sm:$0xf]
  %v133 = vld [vmem:[%s1 + $0x174] sm:$0xf]
  %v134 = vld [vmem:[%s1 + $0x178] sm:$0xf]
  %v135 = vld [vmem:[%s1 + $0x17c] sm:$0xf]
  %v136 = vld [vmem:[%s1 + $0x180] sm:$0xf]
  %v137 = vld [vmem:[%s1 + $0x184] sm:$0xf]
  %v138 = vld [vmem:[%s1 + $0x188] sm:$0xf]
  %v139 = vld [vmem:[%s1 + $0x18c] sm:$0xf]
  %v140 = vld [vmem:[%s1 + $0x190] sm:$0xf]
  %v141 = vld [vmem:[%s1 + $0x194] sm:$0xf]
  %v142 = vld [vmem:[%s1 + $0x198] sm:$0xf]
  %v143 = vld [vmem:[%s1 + $0x19c] sm:$0xf]
  %v144 = vld [vmem:[%s1 + $0x1a0] sm:$0xf]
  %v145 = vld [vmem:[%s1 + $0x1a4] sm:$0xf]
  %v146 = vld [vmem:[%s1 + $0x1a8] sm:$0xf]
  %v147 = vld [vmem:[%s1 + $0x1ac] sm:$0xf]
  %v148 = vld [vmem:[%s1 + $0x1b0] sm:$0xf]
  %v149 = vld [vmem:[%s1 + $0x1b4] sm:$0xf]
  %v150 = vld [vmem:[%s1 + $0x1b8] sm:$0xf]
  %v151 = vld [vmem:[%s1 + $0x1bc] sm:$0xf]
  %v152 = vld [vmem:[%s1 + $0x1c0] sm:$0xf]
  %v153 = vld [vmem:[%s1 + $0x1c4] sm:$0xf]
  %v154 = vld [vmem:[%s1 + $0x1c8] sm:$0xf]
  %v155 = vld [vmem:[%s1 + $0x1cc] sm:$0xf]
  %v156 = vld [vmem:[%s1 + $0x1d0] sm:$0xf]
  %v157 = vld [vmem:[%s1 + $0x1d4] sm:$0xf]
  %v158 = vld [vmem:[%s1 + $0x1d8] sm:$0xf]
  %v159 = vld [vmem:[%s1 + $0x1dc] sm:$0xf]
  %v160 = vld [vmem:[%s1 + $0x1e0] sm:$0xf]
  %v161 = vld [vmem:[%s1 + $0x1e4] sm:$0xf]
  %v162 = vld [vmem:[%s1 + $0x1e8] sm:$0xf]
  %v163 = vld [vmem:[%s1 + $0x1ec] sm:$0xf]
  %v164 = vld [vmem:[%s1 + $0x1f0] sm:$0xf]
  %v165 = vld [vmem:[%s1 + $0x1f4] sm:$0xf]
  %v166 = vld [vmem:[%s1 + $0x1f8] sm:$0xf]
  %v167 = vld [vmem:[%s1 + $0x1fc] sm:$0xf]
  %v168 = vld [vmem:[%s1 + $0x200] sm:$0xf]
  %v169 = vld [vmem:[%s1 + $0x204] sm:$0xf]
  %v170 = vld [vmem:[%s1 + $0x208] sm:$0xf]
  %v171 = vld [vmem:[%s1 + $0x20c] sm:$0xf]
  %v172 = vld [vmem:[%s1 + $0x210] sm:$0xf]
  %v173 = vld [vmem:[%s1 + $0x214] sm:$0xf]
  %v174 = vld [vmem:[%s1 + $0x218] sm:$0xf]
  %v175 = vld [vmem:[%s1 + $0x21c] sm:$0xf]
  %v176 = vld [vmem:[%s1 + $0x220] sm:$0xf]
  %v177 = vld [vmem:[%s1 + $0x224] sm:$0xf]
  %v178 = vld [vmem:[%s1 + $0x228] sm:$0xf]
  %v179 = vld [vmem:[%s1 + $0x22c] sm:$0xf]
  %v180 = vld [vmem:[%s1 + $0x230] sm:$0xf]
  %v181 = vld [vmem:[%s1 + $0x234] sm:$0xf]
  %v182 = vld [vmem:[%s1 + $0x238] sm:$0xf]
  %v183 = vld [vmem:[%s1 + $0x23c] sm:$0xf]
  %v184 = vld [vmem:[%s1 + $0x240] sm:$0xf]
  %v185 = vld [vmem:[%s1 + $0x244] sm:$0xf]
  %v186 = vld [vmem:[%s1 + $0x248] sm:$0xf]
  %v187 = vld [vmem:[%s1 + $0x24c] sm:$0xf]
  %v188 = vld [vmem:[%s1 + $0x250] sm:$0xf]
  %v189 = vld [vmem:[%s1 + $0x254] sm:$0xf]
  %v190 = vld [vmem:[%s1 + $0x258] sm:$0xf]
  %v191 = vld [vmem:[%s1 + $0x25c] sm:$0xf]
  %v192 = vld [vmem:[%s1 + $0x260] sm:$0xf]
  %v193 = vld [vmem:[%s1 + $0x264] sm:$0xf]
  %v194 = vld [vmem:[%s1 + $0x268] sm:$0xf]
  %v195 = vld [vmem:[%s1 + $0x26c] sm:$0xf]
  %v196 = vld [vmem:[%s1 + $0x270] sm:$0xf]
  %v197 = vld [vmem:[%s1 + $0x274] sm:$0xf]
  %v198 = vld [vmem:[%s1 + $0x278] sm:$0xf]
  %v199 = vld [vmem:[%s1 + $0x27c] sm:$0xf]
  %v200 = vld [vmem:[%s1 + $0x280] sm:$0xf]
  %v201 = vld [vmem:[%s1 + $0x284] sm:$0xf]
  %v202 = vld [vmem:[%s1 + $0x288] sm:$0xf]
  %v203 = vld [vmem:[%s1 + $0x28c] sm:$0xf]
  %v204 = vld [vmem:[%s1 + $0x290] sm:$0xf]
  %v205 = vld [vmem:[%s1 + $0x294] sm:$0xf]
  %v206 = vld [vmem:[%s1 + $0x298] sm:$0xf]
  %v207 = vld [vmem:[%s1 + $0x29c] sm:$0xf]
  %v208 = vld [vmem:[%s1 + $0x2a0] sm:$0xf]
  %v209 = vld [vmem:[%s1 + $0x2a4] sm:$0xf]
  %v210 = vld [vmem:[%s1 + $0x2a8] sm:$0xf]
  %v211 = vld [vmem:[%s1 + $0x2ac] sm:$0xf]
  %v212 = vld [vmem:[%s1 + $0x2b0] sm:$0xf]
  %v213 = vld [vmem:[%s1 + $0x2b4] sm:$0xf]
  %v214 = vld [vmem:[%s1 + $0x2b8] sm:$0xf]
  %v215 = vld [vmem:[%s1 + $0x2bc] sm:$0xf]
  %v216 = vld [vmem:[%s1 + $0x2c0] sm:$0xf]
  %v217 = vld [vmem:[%s1 + $0x2c4] sm:$0xf]
  %v218 = vld [vmem:[%s1 + $0x2c8] sm:$0xf]
  %v219 = vld [vmem:[%s1 + $0x2cc] sm:$0xf]
  %v220 = vld [vmem:[%s1 + $0x2d0] sm:$0xf]
  %v221 = vld [vmem:[%s1 + $0x2d4] sm:$0xf]
  %v222 = vld [vmem:[%s1 + $0x2d8] sm:$0xf]
  %v223 = vld [vmem:[%s1 + $0x2dc] sm:$0xf]
  %v224 = vld [vmem:[%s1 + $0x2e0] sm:$0xf]
  %v225 = vld [vmem:[%s1 + $0x2e4] sm:$0xf]
  %v226 = vld [vmem:[%s1 + $0x2e8] sm:$0xf]
  %v227 = vld [vmem:[%s1 + $0x2ec] sm:$0xf]
  %v228 = vld [vmem:[%s1 + $0x2f0] sm:$0xf]
  %v229 = vld [vmem:[%s1 + $0x2f4] sm:$0xf]
  %v230 = vld [vmem:[%s1 + $0x2f8] sm:$0xf]
  %v231 = vld [vmem:[%s1 + $0x2fc] sm:$0xf]
  %v232 = vld [vmem:[%s1 + $0x300] sm:$0xf]
  %v233 = vld [vmem:[%s1 + $0x304] sm:$0xf]
  %v234 = vld [vmem:[%s1 + $0x308] sm:$0xf]
  %v235 = vld [vmem:[%s1 + $0x30c] sm:$0xf]
  %v236 = vld [vmem:[%s1 + $0x310] sm:$0xf]
  %v237 = vld [vmem:[%s1 + $0x314] sm:$0xf]
  %v238 = vld [vmem:[%s1 + $0x318] sm:$0xf]
  %v239 = vld [vmem:[%s1 + $0x31c] sm:$0xf]
  %v240 = vld [vmem:[%s1 + $0x320] sm:$0xf]
  %v241 = vld [vmem:[%s1 + $0x324] sm:$0xf]
  %v242 = vld [vmem:[%s1 + $0x328] sm:$0xf]
  %v243 = vld [vmem:[%s1 + $0x32c] sm:$0xf]
  %v244 = vld [vmem:[%s1 + $0x330] sm:$0xf]
  %v245 = vld [vmem:[%s1 + $0x334] sm:$0xf]
  %v246 = vld [vmem:[%s1 + $0x338] sm:$0xf]
  %v247 = vld [vmem:[%s1 + $0x33c] sm:$0xf]
  %v248 = vld [vmem:[%s1 + $0x340] sm:$0xf]
  %v249 = vld [vmem:[%s1 + $0x344] sm:$0xf]
  %v250 = vld [vmem:[%s1 + $0x348] sm:$0xf]
  %v251 = vld [vmem:[%s1 + $0x34c] sm:$0xf]
  %v252 = vld [vmem:[%s1 + $0x350] sm:$0xf]
  %v253 = vld [vmem:[%s1 + $0x354] sm:$0xf]
  %v254 = vld [vmem:[%s1 + $0x358] sm:$0xf]
  %v255 = vld [vmem:[%s1 + $0x35c] sm:$0xf]
  %v256 = vld [vmem:[%s1 + $0x360] sm:$0xf]
  %v257 = vld [vmem:[%s1 + $0x364] sm:$0xf]
  %v258 = vld [vmem:[%s1 + $0x368] sm:$0xf]
  %v259 = vld [vmem:[%s1 + $0x36c] sm:$0xf]
  %v260 = vld [vmem:[%s1 + $0x370] sm:$0xf]
  %v261 = vld [vmem:[%s1 + $0x374] sm:$0xf]
  %v262 = vld [vmem:[%s1 + $0x378] sm:$0xf]
  %v263 = vld [vmem:[%s1 + $0x37c] sm:$0xf]
  %v264 = vld [vmem:[%s1 + $0x380] sm:$0xf]
  %v265 = vld [vmem:[%s1 + $0x384] sm:$0xf]
  %v266 = vld [vmem:[%s1 + $0x388] sm:$0xf]
  %v267 = vld [vmem:[%s1 + $0x38c] sm:$0xf]
  %v268 = vld [vmem:[%s1 + $0x390] sm:$0xf]
  %v269 = vld [vmem:[%s1 + $0x394] sm:$0xf]
  %v270 = vld [vmem:[%s1 + $0x398] sm:$0xf]
  %v271 = vld [vmem:[%s1 + $0x39c] sm:$0xf]
  %v272 = vld [vmem:[%s1 + $0x3a0] sm:$0xf]
  %v273 = vld [vmem:[%s1 + $0x3a4] sm:$0xf]
  %v274 = vld [vmem:[%s1 + $0x3a8] sm:$0xf]
  %v275 = vld [vmem:[%s1 + $0x3ac] sm:$0xf]
  %v276 = vld [vmem:[%s1 + $0x3b0] sm:$0xf]
  %v277 = vld [vmem:[%s1 + $0x3b4] sm:$0xf]
  %v278 = vld [vmem:[%s1 + $0x3b8] sm:$0xf]
  %v279 = vld [vmem:[%s1 + $0x3bc] sm:$0xf]
  %v280 = vld [vmem:[%s1 + $0x3c0] sm:$0xf]
  %v281 = vld [vmem:[%s1 + $0x3c4] sm:$0xf]
  %v282 = vld [vmem:[%s1 + $0x3c8] sm:$0xf]
  %v283 = vld [vmem:[%s1 + $0x3cc] sm:$0xf]
  %v284 = vld [vmem:[%s1 + $0x3d0] sm:$0xf]
  %v285 = vld [vmem:[%s1 + $0x3d4] sm:$0xf]
  %v286 = vld [vmem:[%s1 + $0x3d8] sm:$0xf]
  %v287 = vld [vmem:[%s1 + $0x3dc] sm:$0xf]
  %v288 = vld [vmem:[%s1 + $0x3e0] sm:$0xf]
  %v289 = vld [vmem:[%s1 + $0x3e4] sm:$0xf]
  %v290 = vld [vmem:[%s1 + $0x3e8] sm:$0xf]
  %v291 = vld [vmem:[%s1 + $0x3ec] sm:$0xf]
  %v292 = vld [vmem:[%s1 + $0x3f0] sm:$0xf]
  %v293 = vld [vmem:[%s1 + $0x3f4] sm:$0xf]
  %v294 = vld [vmem:[%s1 + $0x3f8] sm:$0xf]
  %v295 = vld [vmem:[%s1 + $0x3fc] sm:$0xf]
  %v296 = vld [vmem:[%s1 + $0x400] sm:$0xf]
  %v297 = vld [vmem:[%s1 + $0x404] sm:$0xf]
  %v298 = vld [vmem:[%s1 + $0x408] sm:$0xf]
  %v299 = vld [vmem:[%s1 + $0x40c] sm:$0xf]
  %v300 = vld [vmem:[%s1 + $0x410] sm:$0xf]
  %v301 = vld [vmem:[%s1 + $0x414] sm:$0xf]
  %v302 = vld [vmem:[%s1 + $0x418] sm:$0xf]
  %v303 = vld [vmem:[%s1 + $0x41c] sm:$0xf]
  %v304 = vld [vmem:[%s1 + $0x420] sm:$0xf]
  %v305 = vld [vmem:[%s1 + $0x424] sm:$0xf]
  %v306 = vld [vmem:[%s1 + $0x428] sm:$0xf]
  %v307 = vld [vmem:[%s1 + $0x42c] sm:$0xf]
  %v308 = vld [vmem:[%s1 + $0x430] sm:$0xf]
  %v309 = vld [vmem:[%s1 + $0x434] sm:$0xf]
  %v310 = vld [vmem:[%s1 + $0x438] sm:$0xf]
  %v311 = vld [vmem:[%s1 + $0x43c] sm:$0xf]
  %v312 = vld [vmem:[%s1 + $0x440] sm:$0xf]
  %v313 = vld [vmem:[%s1 + $0x444] sm:$0xf]
  %v314 = vld [vmem:[%s1 + $0x448] sm:$0xf]
  %v315 = vld [vmem:[%s1 + $0x44c] sm:$0xf]
  %v316 = vld [vmem:[%s1 + $0x450] sm:$0xf]
  %v317 = vld [vmem:[%s1 + $0x454] sm:$0xf]
  %v318 = vld [vmem:[%s1 + $0x458] sm:$0xf]
  %v319 = vld [vmem:[%s1 + $0x45c] sm:$0xf]
  %v320 = vld [vmem:[%s1 + $0x460] sm:$0xf]
  %v321 = vld [vmem:[%s1 + $0x464] sm:$0xf]
  %v322 = vld [vmem:[%s1 + $0x468] sm:$0xf]
  %v323 = vld [vmem:[%s1 + $0x46c] sm:$0xf]
  %v324 = vld [vmem:[%s1 + $0x470] sm:$0xf]
  %v325 = vld [vmem:[%s1 + $0x474] sm:$0xf]
  %v326 = vld [vmem:[%s1 + $0x478] sm:$0xf]
  %v327 = vld [vmem:[%s1 + $0x47c] sm:$0xf]
  %v328 = vld [vmem:[%s1 + $0x480] sm:$0xf]
  %v329 = vld [vmem:[%s1 + $0x484] sm:$0xf]
  %v330 = vld [vmem:[%s1 + $0x488] sm:$0xf]
  %v331 = vld [vmem:[%s1 + $0x48c] sm:$0xf]
  %v332 = vld [vmem:[%s1 + $0x490] sm:$0xf]
  %v333 = vld [vmem:[%s1 + $0x494] sm:$0xf]
  %v334 = vld [vmem:[%s1 + $0x498] sm:$0xf]
  %v335 = vld [vmem:[%s1 + $0x49c] sm:$0xf]
  %v336 = vld [vmem:[%s1 + $0x4a0] sm:$0xf]
  %v337 = vld [vmem:[%s1 + $0x4a4] sm:$0xf]
  %v338 = vld [vmem:[%s1 + $0x4a8] sm:$0xf]
  %v339 = vld [vmem:[%s1 + $0x4ac] sm:$0xf]
  %v340 = vld [vmem:[%s1 + $0x4b0] sm:$0xf]
  %v341 = vld [vmem:[%s1 + $0x4b4] sm:$0xf]
  %v342 = vld [vmem:[%s1 + $0x4b8] sm:$0xf]
  %v343 = vld [vmem:[%s1 + $0x4bc] sm:$0xf]
  %v344 = vld [vmem:[%s1 + $0x4c0] sm:$0xf]
  %v345 = vld [vmem:[%s1 + $0x4c4] sm:$0xf]
  %v346 = vld [vmem:[%s1 + $0x4c8] sm:$0xf]
  %v347 = vld [vmem:[%s1 + $0x4cc] sm:$0xf]
  %v348 = vld [vmem:[%s1 + $0x4d0] sm:$0xf]
  %v349 = vld [vmem:[%s1 + $0x4d4] sm:$0xf]
  %v350 = vld [vmem:[%s1 + $0x4d8] sm:$0xf]
  %v351 = vld [vmem:[%s1 + $0x4dc] sm:$0xf]
  %v352 = vld [vmem:[%s1 + $0x4e0] sm:$0xf]
  %v353 = vld [vmem:[%s1 + $0x4e4] sm:$0xf]
  %v354 = vld [vmem:[%s1 + $0x4e8] sm:$0xf]
  %v355 = vld [vmem:[%s1 + $0x4ec] sm:$0xf]
  %v356 = vld [vmem:[%s1 + $0x4f0] sm:$0xf]
  %v357 = vld [vmem:[%s1 + $0x4f4] sm:$0xf]
  %v358 = vld [vmem:[%s1 + $0x4f8] sm:$0xf]
  %v359 = vld [vmem:[%s1 + $0x4fc] sm:$0xf]
  %v360 = vld [vmem:[%s1 + $0x500] sm:$0xf]
  %v361 = vld [vmem:[%s1 + $0x504] sm:$0xf]
  %v362 = vld [vmem:[%s1 + $0x508] sm:$0xf]
  %v363 = vld [vmem:[%s1 + $0x50c] sm:$0xf]
  %v364 = vld [vmem:[%s1 + $0x510] sm:$0xf]
  %v365 = vld [vmem:[%s1 + $0x514] sm:$0xf]
  %v366 = vld [vmem:[%s1 + $0x518] sm:$0xf]
  %v367 = vld [vmem:[%s1 + $0x51c] sm:$0xf]
  %v368 = vld [vmem:[%s1 + $0x520] sm:$0xf]
  %v369 = vld [vmem:[%s1 + $0x524] sm:$0xf]
  %v370 = vld [vmem:[%s1 + $0x528] sm:$0xf]
  %v371 = vld [vmem:[%s1 + $0x52c] sm:$0xf]
  %v372 = vld [vmem:[%s1 + $0x530] sm:$0xf]
  %v373 = vld [vmem:[%s1 + $0x534] sm:$0xf]
  %v374 = vld [vmem:[%s1 + $0x538] sm:$0xf]
  %v375 = vld [vmem:[%s1 + $0x53c] sm:$0xf]
  %v376 = vld [vmem:[%s1 + $0x540] sm:$0xf]
  %v377 = vld [vmem:[%s1 + $0x544] sm:$0xf]
  %v378 = vld [vmem:[%s1 + $0x548] sm:$0xf]
  %v379 = vld [vmem:[%s1 + $0x54c] sm:$0xf]
  %v380 = vld [vmem:[%s1 + $0x550] sm:$0xf]
  %v381 = vld [vmem:[%s1 + $0x554] sm:$0xf]
  %v382 = vld [vmem:[%s1 + $0x558] sm:$0xf]
  %v383 = vld [vmem:[%s1 + $0x55c] sm:$0xf]
  %v384 = vld [vmem:[%s1 + $0x560] sm:$0xf]
  %v385 = vld [vmem:[%s1 + $0x564] sm:$0xf]
  %v386 = vld [vmem:[%s1 + $0x568] sm:$0xf]
  %v387 = vld [vmem:[%s1 + $0x56c] sm:$0xf]
  %v388 = vld [vmem:[%s1 + $0x570] sm:$0xf]
  %v389 = vld [vmem:[%s1 + $0x574] sm:$0xf]
  %v390 = vld [vmem:[%s1 + $0x578] sm:$0xf]
  %v391 = vld [vmem:[%s1 + $0x57c] sm:$0xf]
  %v392 = vld [vmem:[%s1 + $0x580] sm:$0xf]
  %v393 = vld [vmem:[%s1 + $0x584] sm:$0xf]
  %v394 = vld [vmem:[%s1 + $0x588] sm:$0xf]
  %v395 = vld [vmem:[%s1 + $0x58c] sm:$0xf]
  %v396 = vld [vmem:[%s1 + $0x590] sm:$0xf]
  %v397 = vld [vmem:[%s1 + $0x594] sm:$0xf]
  %v398 = vld [vmem:[%s1 + $0x598] sm:$0xf]
  %v399 = vld [vmem:[%s1 + $0x59c] sm:$0xf]
  %v400 = vld [vmem:[%s1 + $0x5a0] sm:$0xf]
  %v401 = vld [vmem:[%s1 + $0x5a4] sm:$0xf]
  %v402 = vld [vmem:[%s1 + $0x5a8] sm:$0xf]
  %v403 = vld [vmem:[%s1 + $0x5ac] sm:$0xf]
  %v404 = vld [vmem:[%s1 + $0x5b0] sm:$0xf]
  %v405 = vld [vmem:[%s1 + $0x5b4] sm:$0xf]
  %v406 = vld [vmem:[%s1 + $0x5b8] sm:$0xf]
  %v407 = vld [vmem:[%s1 + $0x5bc] sm:$0xf]
  %v408 = vld [vmem:[%s1 + $0x5c0] sm:$0xf]
  %v409 = vld [vmem:[%s1 + $0x5c4] sm:$0xf]
  %v410 = vld [vmem:[%s1 + $0x5c8] sm:$0xf]
  %v411 = vld [vmem:[%s1 + $0x5cc] sm:$0xf]
  %v412 = vld [vmem:[%s1 + $0x5d0] sm:$0xf]
  %v413 = vld [vmem:[%s1 + $0x5d4] sm:$0xf]
  %v414 = vld [vmem:[%s1 + $0x5d8] sm:$0xf]
  %v415 = vld [vmem:[%s1 + $0x5dc] sm:$0xf]
  %v416 = vld [vmem:[%s1 + $0x5e0] sm:$0xf]
  %v417 = vld [vmem:[%s1 + $0x5e4] sm:$0xf]
  %v418 = vld [vmem:[%s1 + $0x5e8] sm:$0xf]
  %v419 = vld [vmem:[%s1 + $0x5ec] sm:$0xf]
  %v420 = vld [vmem:[%s1 + $0x5f0] sm:$0xf]
  %v421 = vld [vmem:[%s1 + $0x5f4] sm:$0xf]
  %v422 = vld [vmem:[%s1 + $0x5f8] sm:$0xf]
  %v423 = vld [vmem:[%s1 + $0x5fc] sm:$0xf]
  %v424 = vld [vmem:[%s1 + $0x600] sm:$0xf]
  %v425 = vld [vmem:[%s1 + $0x604] sm:$0xf]
  %v426 = vld [vmem:[%s1 + $0x608] sm:$0xf]
  %v427 = vld [vmem:[%s1 + $0x60c] sm:$0xf]
  %v428 = vld [vmem:[%s1 + $0x610] sm:$0xf]
  %v429 = vld [vmem:[%s1 + $0x614] sm:$0xf]
  %v430 = vld [vmem:[%s1 + $0x618] sm:$0xf]
  %v431 = vld [vmem:[%s1 + $0x61c] sm:$0xf]
  %v432 = vld [vmem:[%s1 + $0x620] sm:$0xf]
  %v433 = vld [vmem:[%s1 + $0x624] sm:$0xf]
  %v434 = vld [vmem:[%s1 + $0x628] sm:$0xf]
  %v435 = vld [vmem:[%s1 + $0x62c] sm:$0xf]
  %v436 = vld [vmem:[%s1 + $0x630] sm:$0xf]
  %v437 = vld [vmem:[%s1 + $0x634] sm:$0xf]
  %v438 = vld [vmem:[%s1 + $0x638] sm:$0xf]
  %v439 = vld [vmem:[%s1 + $0x63c] sm:$0xf]
  %v440 = vld [vmem:[%s1 + $0x640] sm:$0xf]
  %v441 = vld [vmem:[%s1 + $0x644] sm:$0xf]
  %v442 = vld [vmem:[%s1 + $0x648] sm:$0xf]
  %v443 = vld [vmem:[%s1 + $0x64c] sm:$0xf]
  %v444 = vld [vmem:[%s1 + $0x650] sm:$0xf]
  %v445 = vld [vmem:[%s1 + $0x654] sm:$0xf]
  %v446 = vld [vmem:[%s1 + $0x658] sm:$0xf]
  %v447 = vld [vmem:[%s1 + $0x65c] sm:$0xf]
  %v448 = vld [vmem:[%s1 + $0x660] sm:$0xf]
  %v449 = vld [vmem:[%s1 + $0x664] sm:$0xf]
  %v450 = vld [vmem:[%s1 + $0x668] sm:$0xf]
  %v451 = vld [vmem:[%s1 + $0x66c] sm:$0xf]
  %v452 = vld [vmem:[%s1 + $0x670] sm:$0xf]
  %v453 = vld [vmem:[%s1 + $0x674] sm:$0xf]
  %v454 = vld [vmem:[%s1 + $0x678] sm:$0xf]
  %v455 = vld [vmem:[%s1 + $0x67c] sm:$0xf]
  %v456 = vld [vmem:[%s1 + $0x680] sm:$0xf]
  %v457 = vld [vmem:[%s1 + $0x684] sm:$0xf]
  %v458 = vld [vmem:[%s1 + $0x688] sm:$0xf]
  %v459 = vld [vmem:[%s1 + $0x68c] sm:$0xf]
  %v460 = vld [vmem:[%s1 + $0x690] sm:$0xf]
  %v461 = vld [vmem:[%s1 + $0x694] sm:$0xf]
  %v462 = vld [vmem:[%s1 + $0x698] sm:$0xf]
  %v463 = vld [vmem:[%s1 + $0x69c] sm:$0xf]
  %v464 = vld [vmem:[%s1 + $0x6a0] sm:$0xf]
  %v465 = vld [vmem:[%s1 + $0x6a4] sm:$0xf]
  %v466 = vld [vmem:[%s1 + $0x6a8] sm:$0xf]
  %v467 = vld [vmem:[%s1 + $0x6ac] sm:$0xf]
  %v468 = vld [vmem:[%s1 + $0x6b0] sm:$0xf]
  %v469 = vld [vmem:[%s1 + $0x6b4] sm:$0xf]
  %v470 = vld [vmem:[%s1 + $0x6b8] sm:$0xf]
  %v471 = vld [vmem:[%s1 + $0x6bc] sm:$0xf]
  %v472 = vld [vmem:[%s2] sm:$0x1]
  %v474 = vperm.slane %v472, 0
  %v490 = vunpack.c.l.b16 %v26
  %v491 = vunpack.c.h.b16 %v26
  %v492 = vunpack.c.l.b16 %v27
  %v493 = vunpack.c.h.b16 %v27
  %v494 = vunpack.c.l.b16 %v28
  %v495 = vunpack.c.h.b16 %v28
  %v496 = vunpack.c.l.b16 %v29
  %v497 = vunpack.c.h.b16 %v29
  %v498 = vunpack.c.l.b16 %v30
  %v499 = vunpack.c.h.b16 %v30
  %v500 = vunpack.c.l.b16 %v31
  %v501 = vunpack.c.h.b16 %v31
  %v502 = vunpack.c.l.b16 %v32
  %v503 = vunpack.c.h.b16 %v32
  %v504 = vunpack.c.l.b16 %v33
  %v505 = vunpack.c.h.b16 %v33
  %v506 = vunpack.c.l.b16 %v34
  %v507 = vunpack.c.h.b16 %v34
  %v508 = vunpack.c.l.b16 %v35
  %v509 = vunpack.c.h.b16 %v35
  %v510 = vunpack.c.l.b16 %v36
  %v511 = vunpack.c.h.b16 %v36
  %v512 = vunpack.c.l.b16 %v37
  %v513 = vunpack.c.h.b16 %v37
  %v514 = vunpack.c.l.b16 %v38
  %v515 = vunpack.c.h.b16 %v38
  %v516 = vunpack.c.l.b16 %v39
  %v517 = vpack.c.b16 %v490, %v490
  %v518 = vpack.c.b16 %v491, %v491
  %v519 = vpack.c.b16 %v492, %v492
  %v520 = vpack.c.b16 %v493, %v493
  %v521 = vpack.c.b16 %v494, %v494
  %v522 = vpack.c.b16 %v495, %v495
  %v523 = vpack.c.b16 %v496, %v496
  %v524 = vpack.c.b16 %v497, %v497
  %v525 = vpack.c.b16 %v498, %v498
  %v526 = vpack.c.b16 %v499, %v499
  %v527 = vpack.c.b16 %v500, %v500
  %v528 = vpack.c.b16 %v501, %v501
  %v529 = vpack.c.b16 %v502, %v502
  %v530 = vpack.c.b16 %v503, %v503
  %v531 = vpack.c.b16 %v504, %v504
  %v532 = vpack.c.b16 %v505, %v505
  %v533 = vpack.c.b16 %v506, %v506
  %v534 = vpack.c.b16 %v507, %v507
  %v535 = vpack.c.b16 %v508, %v508
  %v536 = vpack.c.b16 %v509, %v509
  %v537 = vpack.c.b16 %v510, %v510
  %v538 = vpack.c.b16 %v511, %v511
  %v539 = vpack.c.b16 %v512, %v512
  %v540 = vpack.c.b16 %v513, %v513
  %v541 = vpack.c.b16 %v514, %v514
  %v542 = vpack.c.b16 %v515, %v515
  %v543 = vpack.c.b16 %v516, %v516
  %v1003 = vunpack.c.l.b16 %v40
  %v1004 = vunpack.c.l.b16 %v41
  %v1005 = vunpack.c.l.b16 %v42
  %v1006 = vunpack.c.l.b16 %v43
  %v1007 = vunpack.c.l.b16 %v44
  %v1008 = vunpack.c.l.b16 %v45
  %v1009 = vunpack.c.l.b16 %v46
  %v1010 = vunpack.c.l.b16 %v47
  %v1011 = vunpack.c.l.b16 %v48
  %v1012 = vunpack.c.l.b16 %v49
  %v1013 = vunpack.c.l.b16 %v50
  %v1014 = vunpack.c.l.b16 %v51
  %v1015 = vunpack.c.l.b16 %v52
  %v1016 = vunpack.c.l.b16 %v53
  %v1017 = vunpack.c.l.b16 %v54
  %v1018 = vunpack.c.l.b16 %v55
  %v1019 = vunpack.c.l.b16 %v56
  %v1020 = vunpack.c.l.b16 %v57
  %v1021 = vunpack.c.l.b16 %v58
  %v1022 = vunpack.c.l.b16 %v59
  %v1023 = vunpack.c.l.b16 %v60
  %v1024 = vunpack.c.l.b16 %v61
  %v1025 = vunpack.c.l.b16 %v62
  %v1026 = vunpack.c.l.b16 %v63
  %v1027 = vunpack.c.l.b16 %v64
  %v1028 = vunpack.c.l.b16 %v65
  %v1029 = vunpack.c.l.b16 %v66
  %v1030 = vunpack.c.l.b16 %v67
  %v1031 = vunpack.c.l.b16 %v68
  %v1032 = vunpack.c.l.b16 %v69
  %v1033 = vunpack.c.l.b16 %v70
  %v1034 = vunpack.c.l.b16 %v71
  %v1035 = vunpack.c.l.b16 %v72
  %v1036 = vunpack.c.l.b16 %v73
  %v1037 = vunpack.c.l.b16 %v74
  %v1038 = vunpack.c.l.b16 %v75
  %v1039 = vunpack.c.l.b16 %v76
  %v1040 = vunpack.c.l.b16 %v77
  %v1041 = vunpack.c.l.b16 %v78
  %v1042 = vunpack.c.l.b16 %v79
  %v1043 = vunpack.c.l.b16 %v80
  %v1044 = vunpack.c.l.b16 %v81
  %v1045 = vunpack.c.l.b16 %v82
  %v1046 = vunpack.c.l.b16 %v83
  %v1047 = vunpack.c.l.b16 %v84
  %v1048 = vunpack.c.l.b16 %v85
  %v1049 = vunpack.c.l.b16 %v86
  %v1050 = vunpack.c.l.b16 %v87
  %v1051 = vunpack.c.l.b16 %v88
  %v1052 = vunpack.c.l.b16 %v89
  %v1053 = vunpack.c.l.b16 %v90
  %v1054 = vunpack.c.l.b16 %v91
  %v1055 = vunpack.c.l.b16 %v92
  %v1056 = vunpack.c.l.b16 %v93
  %v1057 = vunpack.c.l.b16 %v94
  %v1058 = vunpack.c.l.b16 %v95
  %v1059 = vunpack.c.l.b16 %v96
  %v1060 = vunpack.c.l.b16 %v97
  %v1061 = vunpack.c.l.b16 %v98
  %v1062 = vunpack.c.l.b16 %v99
  %v1063 = vunpack.c.l.b16 %v100
  %v1064 = vunpack.c.l.b16 %v101
  %v1065 = vunpack.c.l.b16 %v102
  %v1066 = vunpack.c.l.b16 %v103
  %v1067 = vunpack.c.l.b16 %v104
  %v1068 = vunpack.c.l.b16 %v105
  %v1069 = vunpack.c.l.b16 %v106
  %v1070 = vunpack.c.l.b16 %v107
  %v1071 = vunpack.c.l.b16 %v108
  %v1072 = vunpack.c.l.b16 %v109
  %v1073 = vunpack.c.l.b16 %v110
  %v1074 = vunpack.c.l.b16 %v111
  %v1075 = vunpack.c.l.b16 %v112
  %v1076 = vunpack.c.l.b16 %v113
  %v1077 = vunpack.c.l.b16 %v114
  %v1078 = vunpack.c.l.b16 %v115
  %v1079 = vunpack.c.l.b16 %v116
  %v1080 = vunpack.c.l.b16 %v117
  %v1081 = vunpack.c.l.b16 %v118
  %v1082 = vunpack.c.l.b16 %v119
  %v1083 = vunpack.c.l.b16 %v120
  %v1084 = vunpack.c.l.b16 %v121
  %v1085 = vunpack.c.l.b16 %v122
  %v1086 = vunpack.c.l.b16 %v123
  %v1087 = vunpack.c.l.b16 %v124
  %v1088 = vunpack.c.l.b16 %v125
  %v1089 = vunpack.c.l.b16 %v126
  %v1090 = vunpack.c.l.b16 %v127
  %v1091 = vunpack.c.l.b16 %v128
  %v1092 = vunpack.c.l.b16 %v129
  %v1093 = vunpack.c.l.b16 %v130
  %v1094 = vunpack.c.l.b16 %v131
  %v1095 = vunpack.c.l.b16 %v132
  %v1096 = vunpack.c.l.b16 %v133
  %v1097 = vunpack.c.l.b16 %v134
  %v1098 = vunpack.c.l.b16 %v135
  %v1099 = vunpack.c.l.b16 %v136
  %v1100 = vunpack.c.l.b16 %v137
  %v1101 = vunpack.c.l.b16 %v138
  %v1102 = vunpack.c.l.b16 %v139
  %v1103 = vunpack.c.l.b16 %v140
  %v1104 = vunpack.c.l.b16 %v141
  %v1105 = vunpack.c.l.b16 %v142
  %v1106 = vunpack.c.l.b16 %v143
  %v1107 = vunpack.c.l.b16 %v144
  %v1108 = vunpack.c.l.b16 %v145
  %v1109 = vunpack.c.l.b16 %v146
  %v1110 = vunpack.c.l.b16 %v147
  %v1111 = vunpack.c.l.b16 %v148
  %v1112 = vunpack.c.l.b16 %v149
  %v1113 = vunpack.c.l.b16 %v150
  %v1114 = vunpack.c.l.b16 %v151
  %v1115 = vunpack.c.l.b16 %v152
  %v1116 = vunpack.c.l.b16 %v153
  %v1117 = vunpack.c.l.b16 %v154
  %v1118 = vunpack.c.l.b16 %v155
  %v1119 = vunpack.c.l.b16 %v156
  %v1120 = vunpack.c.l.b16 %v157
  %v1121 = vunpack.c.l.b16 %v158
  %v1122 = vunpack.c.l.b16 %v159
  %v1123 = vunpack.c.l.b16 %v160
  %v1124 = vunpack.c.l.b16 %v161
  %v1125 = vunpack.c.l.b16 %v162
  %v1126 = vunpack.c.l.b16 %v163
  %v1127 = vunpack.c.l.b16 %v164
  %v1128 = vunpack.c.l.b16 %v165
  %v1129 = vunpack.c.l.b16 %v166
  %v1130 = vunpack.c.l.b16 %v167
  %v1131 = vunpack.c.l.b16 %v168
  %v1132 = vunpack.c.l.b16 %v169
  %v1133 = vunpack.c.l.b16 %v170
  %v1134 = vunpack.c.l.b16 %v171
  %v1135 = vunpack.c.l.b16 %v172
  %v1136 = vunpack.c.l.b16 %v173
  %v1137 = vunpack.c.l.b16 %v174
  %v1138 = vunpack.c.l.b16 %v175
  %v1139 = vunpack.c.l.b16 %v176
  %v1140 = vunpack.c.l.b16 %v177
  %v1141 = vunpack.c.l.b16 %v178
  %v1142 = vunpack.c.l.b16 %v179
  %v1143 = vunpack.c.l.b16 %v180
  %v1144 = vunpack.c.l.b16 %v181
  %v1145 = vunpack.c.l.b16 %v182
  %v1146 = vunpack.c.l.b16 %v183
  %v1147 = vunpack.c.l.b16 %v184
  %v1148 = vunpack.c.l.b16 %v185
  %v1149 = vunpack.c.l.b16 %v186
  %v1150 = vunpack.c.l.b16 %v187
  %v1151 = vunpack.c.l.b16 %v188
  %v1152 = vunpack.c.l.b16 %v189
  %v1153 = vunpack.c.l.b16 %v190
  %v1154 = vunpack.c.l.b16 %v191
  %v1155 = vunpack.c.l.b16 %v192
  %v1156 = vunpack.c.l.b16 %v193
  %v1157 = vunpack.c.l.b16 %v194
  %v1158 = vunpack.c.l.b16 %v195
  %v1159 = vunpack.c.l.b16 %v196
  %v1160 = vunpack.c.l.b16 %v197
  %v1161 = vunpack.c.l.b16 %v198
  %v1162 = vunpack.c.l.b16 %v199
  %v1163 = vunpack.c.l.b16 %v200
  %v1164 = vunpack.c.l.b16 %v201
  %v1165 = vunpack.c.l.b16 %v202
  %v1166 = vunpack.c.l.b16 %v203
  %v1167 = vunpack.c.l.b16 %v204
  %v1168 = vunpack.c.l.b16 %v205
  %v1169 = vunpack.c.l.b16 %v206
  %v1170 = vunpack.c.l.b16 %v207
  %v1171 = vunpack.c.l.b16 %v208
  %v1172 = vunpack.c.l.b16 %v209
  %v1173 = vunpack.c.l.b16 %v210
  %v1174 = vunpack.c.l.b16 %v211
  %v1175 = vunpack.c.l.b16 %v212
  %v1176 = vunpack.c.l.b16 %v213
  %v1177 = vunpack.c.l.b16 %v214
  %v1178 = vunpack.c.l.b16 %v215
  %v1179 = vunpack.c.l.b16 %v216
  %v1180 = vunpack.c.l.b16 %v217
  %v1181 = vunpack.c.l.b16 %v218
  %v1182 = vunpack.c.l.b16 %v219
  %v1183 = vunpack.c.l.b16 %v220
  %v1184 = vunpack.c.l.b16 %v221
  %v1185 = vunpack.c.l.b16 %v222
  %v1186 = vunpack.c.l.b16 %v223
  %v1187 = vunpack.c.l.b16 %v224
  %v1188 = vunpack.c.l.b16 %v225
  %v1189 = vunpack.c.l.b16 %v226
  %v1190 = vunpack.c.l.b16 %v227
  %v1191 = vunpack.c.l.b16 %v228
  %v1192 = vunpack.c.l.b16 %v229
  %v1193 = vunpack.c.l.b16 %v230
  %v1194 = vunpack.c.l.b16 %v231
  %v1195 = vunpack.c.l.b16 %v232
  %v1196 = vunpack.c.l.b16 %v233
  %v1197 = vunpack.c.l.b16 %v234
  %v1198 = vunpack.c.l.b16 %v235
  %v1199 = vunpack.c.l.b16 %v236
  %v1200 = vunpack.c.l.b16 %v237
  %v1201 = vunpack.c.l.b16 %v238
  %v1202 = vunpack.c.l.b16 %v239
  %v1203 = vunpack.c.l.b16 %v240
  %v1204 = vunpack.c.l.b16 %v241
  %v1205 = vunpack.c.l.b16 %v242
  %v1206 = vunpack.c.l.b16 %v243
  %v1207 = vunpack.c.l.b16 %v244
  %v1208 = vunpack.c.l.b16 %v245
  %v1209 = vunpack.c.l.b16 %v246
  %v1210 = vunpack.c.l.b16 %v247
  %v1211 = vunpack.c.l.b16 %v248
  %v1212 = vunpack.c.l.b16 %v249
  %v1213 = vunpack.c.l.b16 %v250
  %v1214 = vunpack.c.l.b16 %v251
  %v1215 = vunpack.c.l.b16 %v252
  %v1216 = vunpack.c.l.b16 %v253
  %v1217 = vunpack.c.l.b16 %v254
  %v1218 = vunpack.c.l.b16 %v255
  %v1219 = vunpack.c.l.b16 %v256
  %v1220 = vunpack.c.l.b16 %v257
  %v1221 = vunpack.c.l.b16 %v258
  %v1222 = vunpack.c.l.b16 %v259
  %v1223 = vunpack.c.l.b16 %v260
  %v1224 = vunpack.c.l.b16 %v261
  %v1225 = vunpack.c.l.b16 %v262
  %v1226 = vunpack.c.l.b16 %v263
  %v1227 = vunpack.c.l.b16 %v264
  %v1228 = vunpack.c.l.b16 %v265
  %v1229 = vunpack.c.l.b16 %v266
  %v1230 = vunpack.c.l.b16 %v267
  %v1231 = vunpack.c.l.b16 %v268
  %v1232 = vunpack.c.l.b16 %v269
  %v1233 = vunpack.c.l.b16 %v270
  %v1234 = vunpack.c.l.b16 %v271
  %v1235 = vunpack.c.l.b16 %v272
  %v1236 = vunpack.c.l.b16 %v273
  %v1237 = vunpack.c.l.b16 %v274
  %v1238 = vunpack.c.l.b16 %v275
  %v1239 = vunpack.c.l.b16 %v276
  %v1240 = vunpack.c.l.b16 %v277
  %v1241 = vunpack.c.l.b16 %v278
  %v1242 = vunpack.c.l.b16 %v279
  %v1243 = vunpack.c.l.b16 %v280
  %v1244 = vunpack.c.l.b16 %v281
  %v1245 = vunpack.c.l.b16 %v282
  %v1246 = vunpack.c.l.b16 %v283
  %v1247 = vunpack.c.l.b16 %v284
  %v1248 = vunpack.c.l.b16 %v285
  %v1249 = vunpack.c.l.b16 %v286
  %v1250 = vunpack.c.l.b16 %v287
  %v1251 = vunpack.c.l.b16 %v288
  %v1252 = vunpack.c.l.b16 %v289
  %v1253 = vunpack.c.l.b16 %v290
  %v1254 = vunpack.c.l.b16 %v291
  %v1255 = vunpack.c.l.b16 %v292
  %v1256 = vunpack.c.l.b16 %v293
  %v1257 = vunpack.c.l.b16 %v294
  %v1258 = vunpack.c.l.b16 %v295
  %v1259 = vunpack.c.l.b16 %v296
  %v1260 = vunpack.c.l.b16 %v297
  %v1261 = vunpack.c.l.b16 %v298
  %v1262 = vunpack.c.l.b16 %v299
  %v1263 = vunpack.c.l.b16 %v300
  %v1264 = vunpack.c.l.b16 %v301
  %v1265 = vunpack.c.l.b16 %v302
  %v1266 = vunpack.c.l.b16 %v303
  %v1267 = vunpack.c.l.b16 %v304
  %v1268 = vunpack.c.l.b16 %v305
  %v1269 = vunpack.c.l.b16 %v306
  %v1270 = vunpack.c.l.b16 %v307
  %v1271 = vunpack.c.l.b16 %v308
  %v1272 = vunpack.c.l.b16 %v309
  %v1273 = vunpack.c.l.b16 %v310
  %v1274 = vunpack.c.l.b16 %v311
  %v1275 = vunpack.c.l.b16 %v312
  %v1276 = vunpack.c.l.b16 %v313
  %v1277 = vunpack.c.l.b16 %v314
  %v1278 = vunpack.c.l.b16 %v315
  %v1279 = vunpack.c.l.b16 %v316
  %v1280 = vunpack.c.l.b16 %v317
  %v1281 = vunpack.c.l.b16 %v318
  %v1282 = vunpack.c.l.b16 %v319
  %v1283 = vunpack.c.l.b16 %v320
  %v1284 = vunpack.c.l.b16 %v321
  %v1285 = vunpack.c.l.b16 %v322
  %v1286 = vunpack.c.l.b16 %v323
  %v1287 = vunpack.c.l.b16 %v324
  %v1288 = vunpack.c.l.b16 %v325
  %v1289 = vunpack.c.l.b16 %v326
  %v1290 = vunpack.c.l.b16 %v327
  %v1291 = vunpack.c.l.b16 %v328
  %v1292 = vunpack.c.l.b16 %v329
  %v1293 = vunpack.c.l.b16 %v330
  %v1294 = vunpack.c.l.b16 %v331
  %v1295 = vunpack.c.l.b16 %v332
  %v1296 = vunpack.c.l.b16 %v333
  %v1297 = vunpack.c.l.b16 %v334
  %v1298 = vunpack.c.l.b16 %v335
  %v1299 = vunpack.c.l.b16 %v336
  %v1300 = vunpack.c.l.b16 %v337
  %v1301 = vunpack.c.l.b16 %v338
  %v1302 = vunpack.c.l.b16 %v339
  %v1303 = vunpack.c.l.b16 %v340
  %v1304 = vunpack.c.l.b16 %v341
  %v1305 = vunpack.c.l.b16 %v342
  %v1306 = vunpack.c.l.b16 %v343
  %v1307 = vunpack.c.l.b16 %v344
  %v1308 = vunpack.c.l.b16 %v345
  %v1309 = vunpack.c.l.b16 %v346
  %v1310 = vunpack.c.l.b16 %v347
  %v1311 = vunpack.c.l.b16 %v348
  %v1312 = vunpack.c.l.b16 %v349
  %v1313 = vunpack.c.l.b16 %v350
  %v1314 = vunpack.c.l.b16 %v351
  %v1315 = vunpack.c.l.b16 %v352
  %v1316 = vunpack.c.l.b16 %v353
  %v1317 = vunpack.c.l.b16 %v354
  %v1318 = vunpack.c.l.b16 %v355
  %v1319 = vunpack.c.l.b16 %v356
  %v1320 = vunpack.c.l.b16 %v357
  %v1321 = vunpack.c.l.b16 %v358
  %v1322 = vunpack.c.l.b16 %v359
  %v1323 = vunpack.c.l.b16 %v360
  %v1324 = vunpack.c.l.b16 %v361
  %v1325 = vunpack.c.l.b16 %v362
  %v1326 = vunpack.c.l.b16 %v363
  %v1327 = vunpack.c.l.b16 %v364
  %v1328 = vunpack.c.l.b16 %v365
  %v1329 = vunpack.c.l.b16 %v366
  %v1330 = vunpack.c.l.b16 %v367
  %v1331 = vunpack.c.l.b16 %v368
  %v1332 = vunpack.c.l.b16 %v369
  %v1333 = vunpack.c.l.b16 %v370
  %v1334 = vunpack.c.l.b16 %v371
  %v1335 = vunpack.c.l.b16 %v372
  %v1336 = vunpack.c.l.b16 %v373
  %v1337 = vunpack.c.l.b16 %v374
  %v1338 = vunpack.c.l.b16 %v375
  %v1339 = vunpack.c.l.b16 %v376
  %v1340 = vunpack.c.l.b16 %v377
  %v1341 = vunpack.c.l.b16 %v378
  %v1342 = vunpack.c.l.b16 %v379
  %v1343 = vunpack.c.l.b16 %v380
  %v1344 = vunpack.c.l.b16 %v381
  %v1345 = vunpack.c.l.b16 %v382
  %v1346 = vunpack.c.l.b16 %v383
  %v1347 = vunpack.c.l.b16 %v384
  %v1348 = vunpack.c.l.b16 %v385
  %v1349 = vunpack.c.l.b16 %v386
  %v1350 = vunpack.c.l.b16 %v387
  %v1351 = vunpack.c.l.b16 %v388
  %v1352 = vunpack.c.l.b16 %v389
  %v1353 = vunpack.c.l.b16 %v390
  %v1354 = vunpack.c.l.b16 %v391
  %v1355 = vunpack.c.l.b16 %v392
  %v1356 = vunpack.c.l.b16 %v393
  %v1357 = vunpack.c.l.b16 %v394
  %v1358 = vunpack.c.l.b16 %v395
  %v1359 = vunpack.c.l.b16 %v396
  %v1360 = vunpack.c.l.b16 %v397
  %v1361 = vunpack.c.l.b16 %v398
  %v1362 = vunpack.c.l.b16 %v399
  %v1363 = vunpack.c.l.b16 %v400
  %v1364 = vunpack.c.l.b16 %v401
  %v1365 = vunpack.c.l.b16 %v402
  %v1366 = vunpack.c.l.b16 %v403
  %v1367 = vunpack.c.l.b16 %v404
  %v1368 = vunpack.c.l.b16 %v405
  %v1369 = vunpack.c.l.b16 %v406
  %v1370 = vunpack.c.l.b16 %v407
  %v1371 = vunpack.c.l.b16 %v408
  %v1372 = vunpack.c.l.b16 %v409
  %v1373 = vunpack.c.l.b16 %v410
  %v1374 = vunpack.c.l.b16 %v411
  %v1375 = vunpack.c.l.b16 %v412
  %v1376 = vunpack.c.l.b16 %v413
  %v1377 = vunpack.c.l.b16 %v414
  %v1378 = vunpack.c.l.b16 %v415
  %v1379 = vunpack.c.l.b16 %v416
  %v1380 = vunpack.c.l.b16 %v417
  %v1381 = vunpack.c.l.b16 %v418
  %v1382 = vunpack.c.l.b16 %v419
  %v1383 = vunpack.c.l.b16 %v420
  %v1384 = vunpack.c.l.b16 %v421
  %v1385 = vunpack.c.l.b16 %v422
  %v1386 = vunpack.c.l.b16 %v423
  %v1387 = vunpack.c.l.b16 %v424
  %v1388 = vunpack.c.l.b16 %v425
  %v1389 = vunpack.c.l.b16 %v426
  %v1390 = vunpack.c.l.b16 %v427
  %v1391 = vunpack.c.l.b16 %v428
  %v1392 = vunpack.c.l.b16 %v429
  %v1393 = vunpack.c.l.b16 %v430
  %v1394 = vunpack.c.l.b16 %v431
  %v1395 = vunpack.c.l.b16 %v432
  %v1396 = vunpack.c.l.b16 %v433
  %v1397 = vunpack.c.l.b16 %v434
  %v1398 = vunpack.c.l.b16 %v435
  %v1399 = vunpack.c.l.b16 %v436
  %v1400 = vunpack.c.l.b16 %v437
  %v1401 = vunpack.c.l.b16 %v438
  %v1402 = vunpack.c.l.b16 %v439
  %v1403 = vunpack.c.l.b16 %v440
  %v1404 = vunpack.c.l.b16 %v441
  %v1405 = vunpack.c.l.b16 %v442
  %v1406 = vunpack.c.l.b16 %v443
  %v1407 = vunpack.c.l.b16 %v444
  %v1408 = vunpack.c.l.b16 %v445
  %v1409 = vunpack.c.l.b16 %v446
  %v1410 = vunpack.c.l.b16 %v447
  %v1411 = vunpack.c.l.b16 %v448
  %v1412 = vunpack.c.l.b16 %v449
  %v1413 = vunpack.c.l.b16 %v450
  %v1414 = vunpack.c.l.b16 %v451
  %v1415 = vunpack.c.l.b16 %v452
  %v1416 = vunpack.c.l.b16 %v453
  %v1417 = vunpack.c.l.b16 %v454
  %v1418 = vunpack.c.l.b16 %v455
  %v1419 = vunpack.c.l.b16 %v456
  %v1420 = vunpack.c.l.b16 %v457
  %v1421 = vunpack.c.l.b16 %v458
  %v1422 = vunpack.c.l.b16 %v459
  %v1423 = vunpack.c.l.b16 %v460
  %v1424 = vunpack.c.l.b16 %v461
  %v1425 = vunpack.c.l.b16 %v462
  %v1426 = vunpack.c.l.b16 %v463
  %v1427 = vunpack.c.l.b16 %v464
  %v1428 = vunpack.c.l.b16 %v465
  %v1429 = vunpack.c.l.b16 %v466
  %v1430 = vunpack.c.l.b16 %v467
  %v1431 = vunpack.c.l.b16 %v468
  %v1432 = vunpack.c.l.b16 %v469
  %v1433 = vunpack.c.l.b16 %v470
  %v1434 = vunpack.c.l.b16 %v471
  %v1435 = vpack.c.b16 %v1004, %v1003
  %v1436 = vpack.c.b16 %v1006, %v1005
  %v1437 = vpack.c.b16 %v1008, %v1007
  %v1438 = vpack.c.b16 %v1010, %v1009
  %v1439 = vpack.c.b16 %v1012, %v1011
  %v1440 = vpack.c.b16 %v1014, %v1013
  %v1441 = vpack.c.b16 %v1016, %v1015
  %v1442 = vpack.c.b16 %v1018, %v1017
  %v1443 = vpack.c.b16 %v1020, %v1019
  %v1444 = vpack.c.b16 %v1022, %v1021
  %v1445 = vpack.c.b16 %v1024, %v1023
  %v1446 = vpack.c.b16 %v1026, %v1025
  %v1447 = vpack.c.b16 %v1028, %v1027
  %v1448 = vpack.c.b16 %v1030, %v1029
  %v1449 = vpack.c.b16 %v1032, %v1031
  %v1450 = vpack.c.b16 %v1034, %v1033
  %v1451 = vpack.c.b16 %v1036, %v1035
  %v1452 = vpack.c.b16 %v1038, %v1037
  %v1453 = vpack.c.b16 %v1040, %v1039
  %v1454 = vpack.c.b16 %v1042, %v1041
  %v1455 = vpack.c.b16 %v1044, %v1043
  %v1456 = vpack.c.b16 %v1046, %v1045
  %v1457 = vpack.c.b16 %v1048, %v1047
  %v1458 = vpack.c.b16 %v1050, %v1049
  %v1459 = vpack.c.b16 %v1052, %v1051
  %v1460 = vpack.c.b16 %v1054, %v1053
  %v1461 = vpack.c.b16 %v1056, %v1055
  %v1462 = vpack.c.b16 %v1058, %v1057
  %v1463 = vpack.c.b16 %v1060, %v1059
  %v1464 = vpack.c.b16 %v1062, %v1061
  %v1465 = vpack.c.b16 %v1064, %v1063
  %v1466 = vpack.c.b16 %v1066, %v1065
  %v1467 = vpack.c.b16 %v1068, %v1067
  %v1468 = vpack.c.b16 %v1070, %v1069
  %v1469 = vpack.c.b16 %v1072, %v1071
  %v1470 = vpack.c.b16 %v1074, %v1073
  %v1471 = vpack.c.b16 %v1076, %v1075
  %v1472 = vpack.c.b16 %v1078, %v1077
  %v1473 = vpack.c.b16 %v1080, %v1079
  %v1474 = vpack.c.b16 %v1082, %v1081
  %v1475 = vpack.c.b16 %v1084, %v1083
  %v1476 = vpack.c.b16 %v1086, %v1085
  %v1477 = vpack.c.b16 %v1088, %v1087
  %v1478 = vpack.c.b16 %v1090, %v1089
  %v1479 = vpack.c.b16 %v1092, %v1091
  %v1480 = vpack.c.b16 %v1094, %v1093
  %v1481 = vpack.c.b16 %v1096, %v1095
  %v1482 = vpack.c.b16 %v1098, %v1097
  %v1483 = vpack.c.b16 %v1100, %v1099
  %v1484 = vpack.c.b16 %v1102, %v1101
  %v1485 = vpack.c.b16 %v1104, %v1103
  %v1486 = vpack.c.b16 %v1106, %v1105
  %v1487 = vpack.c.b16 %v1108, %v1107
  %v1488 = vpack.c.b16 %v1110, %v1109
  %v1489 = vpack.c.b16 %v1112, %v1111
  %v1490 = vpack.c.b16 %v1114, %v1113
  %v1491 = vpack.c.b16 %v1116, %v1115
  %v1492 = vpack.c.b16 %v1118, %v1117
  %v1493 = vpack.c.b16 %v1120, %v1119
  %v1494 = vpack.c.b16 %v1122, %v1121
  %v1495 = vpack.c.b16 %v1124, %v1123
  %v1496 = vpack.c.b16 %v1126, %v1125
  %v1497 = vpack.c.b16 %v1128, %v1127
  %v1498 = vpack.c.b16 %v1130, %v1129
  %v1499 = vpack.c.b16 %v1132, %v1131
  %v1500 = vpack.c.b16 %v1134, %v1133
  %v1501 = vpack.c.b16 %v1136, %v1135
  %v1502 = vpack.c.b16 %v1138, %v1137
  %v1503 = vpack.c.b16 %v1140, %v1139
  %v1504 = vpack.c.b16 %v1142, %v1141
  %v1505 = vpack.c.b16 %v1144, %v1143
  %v1506 = vpack.c.b16 %v1146, %v1145
  %v1507 = vpack.c.b16 %v1148, %v1147
  %v1508 = vpack.c.b16 %v1150, %v1149
  %v1509 = vpack.c.b16 %v1152, %v1151
  %v1510 = vpack.c.b16 %v1154, %v1153
  %v1511 = vpack.c.b16 %v1156, %v1155
  %v1512 = vpack.c.b16 %v1158, %v1157
  %v1513 = vpack.c.b16 %v1160, %v1159
  %v1514 = vpack.c.b16 %v1162, %v1161
  %v1515 = vpack.c.b16 %v1164, %v1163
  %v1516 = vpack.c.b16 %v1166, %v1165
  %v1517 = vpack.c.b16 %v1168, %v1167
  %v1518 = vpack.c.b16 %v1170, %v1169
  %v1519 = vpack.c.b16 %v1172, %v1171
  %v1520 = vpack.c.b16 %v1174, %v1173
  %v1521 = vpack.c.b16 %v1176, %v1175
  %v1522 = vpack.c.b16 %v1178, %v1177
  %v1523 = vpack.c.b16 %v1180, %v1179
  %v1524 = vpack.c.b16 %v1182, %v1181
  %v1525 = vpack.c.b16 %v1184, %v1183
  %v1526 = vpack.c.b16 %v1186, %v1185
  %v1527 = vpack.c.b16 %v1188, %v1187
  %v1528 = vpack.c.b16 %v1190, %v1189
  %v1529 = vpack.c.b16 %v1192, %v1191
  %v1530 = vpack.c.b16 %v1194, %v1193
  %v1531 = vpack.c.b16 %v1196, %v1195
  %v1532 = vpack.c.b16 %v1198, %v1197
  %v1533 = vpack.c.b16 %v1200, %v1199
  %v1534 = vpack.c.b16 %v1202, %v1201
  %v1535 = vpack.c.b16 %v1204, %v1203
  %v1536 = vpack.c.b16 %v1206, %v1205
  %v1537 = vpack.c.b16 %v1208, %v1207
  %v1538 = vpack.c.b16 %v1210, %v1209
  %v1539 = vpack.c.b16 %v1212, %v1211
  %v1540 = vpack.c.b16 %v1214, %v1213
  %v1541 = vpack.c.b16 %v1216, %v1215
  %v1542 = vpack.c.b16 %v1218, %v1217
  %v1543 = vpack.c.b16 %v1220, %v1219
  %v1544 = vpack.c.b16 %v1222, %v1221
  %v1545 = vpack.c.b16 %v1224, %v1223
  %v1546 = vpack.c.b16 %v1226, %v1225
  %v1547 = vpack.c.b16 %v1228, %v1227
  %v1548 = vpack.c.b16 %v1230, %v1229
  %v1549 = vpack.c.b16 %v1232, %v1231
  %v1550 = vpack.c.b16 %v1234, %v1233
  %v1551 = vpack.c.b16 %v1236, %v1235
  %v1552 = vpack.c.b16 %v1238, %v1237
  %v1553 = vpack.c.b16 %v1240, %v1239
  %v1554 = vpack.c.b16 %v1242, %v1241
  %v1555 = vpack.c.b16 %v1244, %v1243
  %v1556 = vpack.c.b16 %v1246, %v1245
  %v1557 = vpack.c.b16 %v1248, %v1247
  %v1558 = vpack.c.b16 %v1250, %v1249
  %v1559 = vpack.c.b16 %v1252, %v1251
  %v1560 = vpack.c.b16 %v1254, %v1253
  %v1561 = vpack.c.b16 %v1256, %v1255
  %v1562 = vpack.c.b16 %v1258, %v1257
  %v1563 = vpack.c.b16 %v1260, %v1259
  %v1564 = vpack.c.b16 %v1262, %v1261
  %v1565 = vpack.c.b16 %v1264, %v1263
  %v1566 = vpack.c.b16 %v1266, %v1265
  %v1567 = vpack.c.b16 %v1268, %v1267
  %v1568 = vpack.c.b16 %v1270, %v1269
  %v1569 = vpack.c.b16 %v1272, %v1271
  %v1570 = vpack.c.b16 %v1274, %v1273
  %v1571 = vpack.c.b16 %v1276, %v1275
  %v1572 = vpack.c.b16 %v1278, %v1277
  %v1573 = vpack.c.b16 %v1280, %v1279
  %v1574 = vpack.c.b16 %v1282, %v1281
  %v1575 = vpack.c.b16 %v1284, %v1283
  %v1576 = vpack.c.b16 %v1286, %v1285
  %v1577 = vpack.c.b16 %v1288, %v1287
  %v1578 = vpack.c.b16 %v1290, %v1289
  %v1579 = vpack.c.b16 %v1292, %v1291
  %v1580 = vpack.c.b16 %v1294, %v1293
  %v1581 = vpack.c.b16 %v1296, %v1295
  %v1582 = vpack.c.b16 %v1298, %v1297
  %v1583 = vpack.c.b16 %v1300, %v1299
  %v1584 = vpack.c.b16 %v1302, %v1301
  %v1585 = vpack.c.b16 %v1304, %v1303
  %v1586 = vpack.c.b16 %v1306, %v1305
  %v1587 = vpack.c.b16 %v1308, %v1307
  %v1588 = vpack.c.b16 %v1310, %v1309
  %v1589 = vpack.c.b16 %v1312, %v1311
  %v1590 = vpack.c.b16 %v1314, %v1313
  %v1591 = vpack.c.b16 %v1316, %v1315
  %v1592 = vpack.c.b16 %v1318, %v1317
  %v1593 = vpack.c.b16 %v1320, %v1319
  %v1594 = vpack.c.b16 %v1322, %v1321
  %v1595 = vpack.c.b16 %v1324, %v1323
  %v1596 = vpack.c.b16 %v1326, %v1325
  %v1597 = vpack.c.b16 %v1328, %v1327
  %v1598 = vpack.c.b16 %v1330, %v1329
  %v1599 = vpack.c.b16 %v1332, %v1331
  %v1600 = vpack.c.b16 %v1334, %v1333
  %v1601 = vpack.c.b16 %v1336, %v1335
  %v1602 = vpack.c.b16 %v1338, %v1337
  %v1603 = vpack.c.b16 %v1340, %v1339
  %v1604 = vpack.c.b16 %v1342, %v1341
  %v1605 = vpack.c.b16 %v1344, %v1343
  %v1606 = vpack.c.b16 %v1346, %v1345
  %v1607 = vpack.c.b16 %v1348, %v1347
  %v1608 = vpack.c.b16 %v1350, %v1349
  %v1609 = vpack.c.b16 %v1352, %v1351
  %v1610 = vpack.c.b16 %v1354, %v1353
  %v1611 = vpack.c.b16 %v1356, %v1355
  %v1612 = vpack.c.b16 %v1358, %v1357
  %v1613 = vpack.c.b16 %v1360, %v1359
  %v1614 = vpack.c.b16 %v1362, %v1361
  %v1615 = vpack.c.b16 %v1364, %v1363
  %v1616 = vpack.c.b16 %v1366, %v1365
  %v1617 = vpack.c.b16 %v1368, %v1367
  %v1618 = vpack.c.b16 %v1370, %v1369
  %v1619 = vpack.c.b16 %v1372, %v1371
  %v1620 = vpack.c.b16 %v1374, %v1373
  %v1621 = vpack.c.b16 %v1376, %v1375
  %v1622 = vpack.c.b16 %v1378, %v1377
  %v1623 = vpack.c.b16 %v1380, %v1379
  %v1624 = vpack.c.b16 %v1382, %v1381
  %v1625 = vpack.c.b16 %v1384, %v1383
  %v1626 = vpack.c.b16 %v1386, %v1385
  %v1627 = vpack.c.b16 %v1388, %v1387
  %v1628 = vpack.c.b16 %v1390, %v1389
  %v1629 = vpack.c.b16 %v1392, %v1391
  %v1630 = vpack.c.b16 %v1394, %v1393
  %v1631 = vpack.c.b16 %v1396, %v1395
  %v1632 = vpack.c.b16 %v1398, %v1397
  %v1633 = vpack.c.b16 %v1400, %v1399
  %v1634 = vpack.c.b16 %v1402, %v1401
  %v1635 = vpack.c.b16 %v1404, %v1403
  %v1636 = vpack.c.b16 %v1406, %v1405
  %v1637 = vpack.c.b16 %v1408, %v1407
  %v1638 = vpack.c.b16 %v1410, %v1409
  %v1639 = vpack.c.b16 %v1412, %v1411
  %v1640 = vpack.c.b16 %v1414, %v1413
  %v1641 = vpack.c.b16 %v1416, %v1415
  %v1642 = vpack.c.b16 %v1418, %v1417
  %v1643 = vpack.c.b16 %v1420, %v1419
  %v1644 = vpack.c.b16 %v1422, %v1421
  %v1645 = vpack.c.b16 %v1424, %v1423
  %v1646 = vpack.c.b16 %v1426, %v1425
  %v1647 = vpack.c.b16 %v1428, %v1427
  %v1648 = vpack.c.b16 %v1430, %v1429
  %v1649 = vpack.c.b16 %v1432, %v1431
  %v1650 = vpack.c.b16 %v1434, %v1433
  %1867 = vmatpush.bf16.msra.mxu0 %v1442
  %1868 = vmatpush.bf16.msra.mxu0 %v1441
  %1869 = vmatpush.bf16.msra.mxu0 %v1440
  %1870 = vmatpush.bf16.msra.mxu0 %v1439
  %1871 = vmatpush.bf16.msra.mxu0 %v1438
  %1872 = vmatpush.bf16.msra.mxu0 %v1437
  %1873 = vmatpush.bf16.msra.mxu0 %v1436
  %1874 = vmatpush.bf16.msra.mxu0 %v1435
  %1875 = vmatmul.bf16.gmra.mxu0 %v517
  %v1876 = vpop.f32.mrf.mxu0
  %v1877 = vadd.f32 %v474, %v1876
  %v1878 = vpop.f32.mrf.mxu0
  %1879 = vdwg.mxu0
  %1880 = vmatpush.bf16.msra.mxu0 %v1450
  %1881 = vmatpush.bf16.msra.mxu0 %v1449
  %1882 = vmatpush.bf16.msra.mxu0 %v1448
  %1883 = vmatpush.bf16.msra.mxu0 %v1447
  %1884 = vmatpush.bf16.msra.mxu0 %v1446
  %1885 = vmatpush.bf16.msra.mxu0 %v1445
  %1886 = vmatpush.bf16.msra.mxu0 %v1444
  %1887 = vmatpush.bf16.msra.mxu0 %v1443
  %1888 = vmatmul.bf16.gmra.mxu0 %v518
  %v1889 = vpop.f32.mrf.mxu0
  %v1890 = vadd.f32 %v1877, %v1889
  %v1891 = vpop.f32.mrf.mxu0
  %1892 = vdwg.mxu0
  %1893 = vmatpush.bf16.msra.mxu0 %v1458
  %1894 = vmatpush.bf16.msra.mxu0 %v1457
  %1895 = vmatpush.bf16.msra.mxu0 %v1456
  %1896 = vmatpush.bf16.msra.mxu0 %v1455
  %1897 = vmatpush.bf16.msra.mxu0 %v1454
  %1898 = vmatpush.bf16.msra.mxu0 %v1453
  %1899 = vmatpush.bf16.msra.mxu0 %v1452
  %1900 = vmatpush.bf16.msra.mxu0 %v1451
  %1901 = vmatmul.bf16.gmra.mxu0 %v519
  %v1902 = vpop.f32.mrf.mxu0
  %v1903 = vadd.f32 %v1890, %v1902
  %v1904 = vpop.f32.mrf.mxu0
  %1905 = vdwg.mxu0
  %1906 = vmatpush.bf16.msra.mxu0 %v1466
  %1907 = vmatpush.bf16.msra.mxu0 %v1465
  %1908 = vmatpush.bf16.msra.mxu0 %v1464
  %1909 = vmatpush.bf16.msra.mxu0 %v1463
  %1910 = vmatpush.bf16.msra.mxu0 %v1462
  %1911 = vmatpush.bf16.msra.mxu0 %v1461
  %1912 = vmatpush.bf16.msra.mxu0 %v1460
  %1913 = vmatpush.bf16.msra.mxu0 %v1459
  %1914 = vmatmul.bf16.gmra.mxu0 %v520
  %v1915 = vpop.f32.mrf.mxu0
  %v1916 = vadd.f32 %v1903, %v1915
  %v1917 = vpop.f32.mrf.mxu0
  %1918 = vdwg.mxu0
  %1919 = vmatpush.bf16.msra.mxu0 %v1474
  %1920 = vmatpush.bf16.msra.mxu0 %v1473
  %1921 = vmatpush.bf16.msra.mxu0 %v1472
  %1922 = vmatpush.bf16.msra.mxu0 %v1471
  %1923 = vmatpush.bf16.msra.mxu0 %v1470
  %1924 = vmatpush.bf16.msra.mxu0 %v1469
  %1925 = vmatpush.bf16.msra.mxu0 %v1468
  %1926 = vmatpush.bf16.msra.mxu0 %v1467
  %1927 = vmatmul.bf16.gmra.mxu0 %v521
  %v1928 = vpop.f32.mrf.mxu0
  %v1929 = vadd.f32 %v1916, %v1928
  %v1930 = vpop.f32.mrf.mxu0
  %1931 = vdwg.mxu0
  %1932 = vmatpush.bf16.msra.mxu0 %v1482
  %1933 = vmatpush.bf16.msra.mxu0 %v1481
  %1934 = vmatpush.bf16.msra.mxu0 %v1480
  %1935 = vmatpush.bf16.msra.mxu0 %v1479
  %1936 = vmatpush.bf16.msra.mxu0 %v1478
  %1937 = vmatpush.bf16.msra.mxu0 %v1477
  %1938 = vmatpush.bf16.msra.mxu0 %v1476
  %1939 = vmatpush.bf16.msra.mxu0 %v1475
  %1940 = vmatmul.bf16.gmra.mxu0 %v522
  %v1941 = vpop.f32.mrf.mxu0
  %v1942 = vadd.f32 %v1929, %v1941
  %v1943 = vpop.f32.mrf.mxu0
  %1944 = vdwg.mxu0
  %1945 = vmatpush.bf16.msra.mxu0 %v1490
  %1946 = vmatpush.bf16.msra.mxu0 %v1489
  %1947 = vmatpush.bf16.msra.mxu0 %v1488
  %1948 = vmatpush.bf16.msra.mxu0 %v1487
  %1949 = vmatpush.bf16.msra.mxu0 %v1486
  %1950 = vmatpush.bf16.msra.mxu0 %v1485
  %1951 = vmatpush.bf16.msra.mxu0 %v1484
  %1952 = vmatpush.bf16.msra.mxu0 %v1483
  %1953 = vmatmul.bf16.gmra.mxu0 %v523
  %v1954 = vpop.f32.mrf.mxu0
  %v1955 = vadd.f32 %v1942, %v1954
  %v1956 = vpop.f32.mrf.mxu0
  %1957 = vdwg.mxu0
  %1958 = vmatpush.bf16.msra.mxu0 %v1498
  %1959 = vmatpush.bf16.msra.mxu0 %v1497
  %1960 = vmatpush.bf16.msra.mxu0 %v1496
  %1961 = vmatpush.bf16.msra.mxu0 %v1495
  %1962 = vmatpush.bf16.msra.mxu0 %v1494
  %1963 = vmatpush.bf16.msra.mxu0 %v1493
  %1964 = vmatpush.bf16.msra.mxu0 %v1492
  %1965 = vmatpush.bf16.msra.mxu0 %v1491
  %1966 = vmatmul.bf16.gmra.mxu0 %v524
  %v1967 = vpop.f32.mrf.mxu0
  %v1968 = vadd.f32 %v1955, %v1967
  %v1969 = vpop.f32.mrf.mxu0
  %1970 = vdwg.mxu0
  %1971 = vmatpush.bf16.msra.mxu0 %v1506
  %1972 = vmatpush.bf16.msra.mxu0 %v1505
  %1973 = vmatpush.bf16.msra.mxu0 %v1504
  %1974 = vmatpush.bf16.msra.mxu0 %v1503
  %1975 = vmatpush.bf16.msra.mxu0 %v1502
  %1976 = vmatpush.bf16.msra.mxu0 %v1501
  %1977 = vmatpush.bf16.msra.mxu0 %v1500
  %1978 = vmatpush.bf16.msra.mxu0 %v1499
  %1979 = vmatmul.bf16.gmra.mxu0 %v525
  %v1980 = vpop.f32.mrf.mxu0
  %v1981 = vadd.f32 %v1968, %v1980
  %v1982 = vpop.f32.mrf.mxu0
  %1983 = vdwg.mxu0
  %1984 = vmatpush.bf16.msra.mxu0 %v1514
  %1985 = vmatpush.bf16.msra.mxu0 %v1513
  %1986 = vmatpush.bf16.msra.mxu0 %v1512
  %1987 = vmatpush.bf16.msra.mxu0 %v1511
  %1988 = vmatpush.bf16.msra.mxu0 %v1510
  %1989 = vmatpush.bf16.msra.mxu0 %v1509
  %1990 = vmatpush.bf16.msra.mxu0 %v1508
  %1991 = vmatpush.bf16.msra.mxu0 %v1507
  %1992 = vmatmul.bf16.gmra.mxu0 %v526
  %v1993 = vpop.f32.mrf.mxu0
  %v1994 = vadd.f32 %v1981, %v1993
  %v1995 = vpop.f32.mrf.mxu0
  %1996 = vdwg.mxu0
  %1997 = vmatpush.bf16.msra.mxu0 %v1522
  %1998 = vmatpush.bf16.msra.mxu0 %v1521
  %1999 = vmatpush.bf16.msra.mxu0 %v1520
  %2000 = vmatpush.bf16.msra.mxu0 %v1519
  %2001 = vmatpush.bf16.msra.mxu0 %v1518
  %2002 = vmatpush.bf16.msra.mxu0 %v1517
  %2003 = vmatpush.bf16.msra.mxu0 %v1516
  %2004 = vmatpush.bf16.msra.mxu0 %v1515
  %2005 = vmatmul.bf16.gmra.mxu0 %v527
  %v2006 = vpop.f32.mrf.mxu0
  %v2007 = vadd.f32 %v1994, %v2006
  %v2008 = vpop.f32.mrf.mxu0
  %2009 = vdwg.mxu0
  %2010 = vmatpush.bf16.msra.mxu0 %v1530
  %2011 = vmatpush.bf16.msra.mxu0 %v1529
  %2012 = vmatpush.bf16.msra.mxu0 %v1528
  %2013 = vmatpush.bf16.msra.mxu0 %v1527
  %2014 = vmatpush.bf16.msra.mxu0 %v1526
  %2015 = vmatpush.bf16.msra.mxu0 %v1525
  %2016 = vmatpush.bf16.msra.mxu0 %v1524
  %2017 = vmatpush.bf16.msra.mxu0 %v1523
  %2018 = vmatmul.bf16.gmra.mxu0 %v528
  %v2019 = vpop.f32.mrf.mxu0
  %v2020 = vadd.f32 %v2007, %v2019
  %v2021 = vpop.f32.mrf.mxu0
  %2022 = vdwg.mxu0
  %2023 = vmatpush.bf16.msra.mxu0 %v1538
  %2024 = vmatpush.bf16.msra.mxu0 %v1537
  %2025 = vmatpush.bf16.msra.mxu0 %v1536
  %2026 = vmatpush.bf16.msra.mxu0 %v1535
  %2027 = vmatpush.bf16.msra.mxu0 %v1534
  %2028 = vmatpush.bf16.msra.mxu0 %v1533
  %2029 = vmatpush.bf16.msra.mxu0 %v1532
  %2030 = vmatpush.bf16.msra.mxu0 %v1531
  %2031 = vmatmul.bf16.gmra.mxu0 %v529
  %v2032 = vpop.f32.mrf.mxu0
  %v2033 = vadd.f32 %v2020, %v2032
  %v2034 = vpop.f32.mrf.mxu0
  %2035 = vdwg.mxu0
  %2036 = vmatpush.bf16.msra.mxu0 %v1546
  %2037 = vmatpush.bf16.msra.mxu0 %v1545
  %2038 = vmatpush.bf16.msra.mxu0 %v1544
  %2039 = vmatpush.bf16.msra.mxu0 %v1543
  %2040 = vmatpush.bf16.msra.mxu0 %v1542
  %2041 = vmatpush.bf16.msra.mxu0 %v1541
  %2042 = vmatpush.bf16.msra.mxu0 %v1540
  %2043 = vmatpush.bf16.msra.mxu0 %v1539
  %2044 = vmatmul.bf16.gmra.mxu0 %v530
  %v2045 = vpop.f32.mrf.mxu0
  %v2046 = vadd.f32 %v2033, %v2045
  %v2047 = vpop.f32.mrf.mxu0
  %2048 = vdwg.mxu0
  %2049 = vmatpush.bf16.msra.mxu0 %v1554
  %2050 = vmatpush.bf16.msra.mxu0 %v1553
  %2051 = vmatpush.bf16.msra.mxu0 %v1552
  %2052 = vmatpush.bf16.msra.mxu0 %v1551
  %2053 = vmatpush.bf16.msra.mxu0 %v1550
  %2054 = vmatpush.bf16.msra.mxu0 %v1549
  %2055 = vmatpush.bf16.msra.mxu0 %v1548
  %2056 = vmatpush.bf16.msra.mxu0 %v1547
  %2057 = vmatmul.bf16.gmra.mxu0 %v531
  %v2058 = vpop.f32.mrf.mxu0
  %v2059 = vadd.f32 %v2046, %v2058
  %v2060 = vpop.f32.mrf.mxu0
  %2061 = vdwg.mxu0
  %2062 = vmatpush.bf16.msra.mxu0 %v1562
  %2063 = vmatpush.bf16.msra.mxu0 %v1561
  %2064 = vmatpush.bf16.msra.mxu0 %v1560
  %2065 = vmatpush.bf16.msra.mxu0 %v1559
  %2066 = vmatpush.bf16.msra.mxu0 %v1558
  %2067 = vmatpush.bf16.msra.mxu0 %v1557
  %2068 = vmatpush.bf16.msra.mxu0 %v1556
  %2069 = vmatpush.bf16.msra.mxu0 %v1555
  %2070 = vmatmul.bf16.gmra.mxu0 %v532
  %v2071 = vpop.f32.mrf.mxu0
  %v2072 = vadd.f32 %v2059, %v2071
  %v2073 = vpop.f32.mrf.mxu0
  %2074 = vdwg.mxu0
  %2075 = vmatpush.bf16.msra.mxu0 %v1570
  %2076 = vmatpush.bf16.msra.mxu0 %v1569
  %2077 = vmatpush.bf16.msra.mxu0 %v1568
  %2078 = vmatpush.bf16.msra.mxu0 %v1567
  %2079 = vmatpush.bf16.msra.mxu0 %v1566
  %2080 = vmatpush.bf16.msra.mxu0 %v1565
  %2081 = vmatpush.bf16.msra.mxu0 %v1564
  %2082 = vmatpush.bf16.msra.mxu0 %v1563
  %2083 = vmatmul.bf16.gmra.mxu0 %v533
  %v2084 = vpop.f32.mrf.mxu0
  %v2085 = vadd.f32 %v2072, %v2084
  %v2086 = vpop.f32.mrf.mxu0
  %2087 = vdwg.mxu0
  %2088 = vmatpush.bf16.msra.mxu0 %v1578
  %2089 = vmatpush.bf16.msra.mxu0 %v1577
  %2090 = vmatpush.bf16.msra.mxu0 %v1576
  %2091 = vmatpush.bf16.msra.mxu0 %v1575
  %2092 = vmatpush.bf16.msra.mxu0 %v1574
  %2093 = vmatpush.bf16.msra.mxu0 %v1573
  %2094 = vmatpush.bf16.msra.mxu0 %v1572
  %2095 = vmatpush.bf16.msra.mxu0 %v1571
  %2096 = vmatmul.bf16.gmra.mxu0 %v534
  %v2097 = vpop.f32.mrf.mxu0
  %v2098 = vadd.f32 %v2085, %v2097
  %v2099 = vpop.f32.mrf.mxu0
  %2100 = vdwg.mxu0
  %2101 = vmatpush.bf16.msra.mxu0 %v1586
  %2102 = vmatpush.bf16.msra.mxu0 %v1585
  %2103 = vmatpush.bf16.msra.mxu0 %v1584
  %2104 = vmatpush.bf16.msra.mxu0 %v1583
  %2105 = vmatpush.bf16.msra.mxu0 %v1582
  %2106 = vmatpush.bf16.msra.mxu0 %v1581
  %2107 = vmatpush.bf16.msra.mxu0 %v1580
  %2108 = vmatpush.bf16.msra.mxu0 %v1579
  %2109 = vmatmul.bf16.gmra.mxu0 %v535
  %v2110 = vpop.f32.mrf.mxu0
  %v2111 = vadd.f32 %v2098, %v2110
  %v2112 = vpop.f32.mrf.mxu0
  %2113 = vdwg.mxu0
  %2114 = vmatpush.bf16.msra.mxu0 %v1594
  %2115 = vmatpush.bf16.msra.mxu0 %v1593
  %2116 = vmatpush.bf16.msra.mxu0 %v1592
  %2117 = vmatpush.bf16.msra.mxu0 %v1591
  %2118 = vmatpush.bf16.msra.mxu0 %v1590
  %2119 = vmatpush.bf16.msra.mxu0 %v1589
  %2120 = vmatpush.bf16.msra.mxu0 %v1588
  %2121 = vmatpush.bf16.msra.mxu0 %v1587
  %2122 = vmatmul.bf16.gmra.mxu0 %v536
  %v2123 = vpop.f32.mrf.mxu0
  %v2124 = vadd.f32 %v2111, %v2123
  %v2125 = vpop.f32.mrf.mxu0
  %2126 = vdwg.mxu0
  %2127 = vmatpush.bf16.msra.mxu0 %v1602
  %2128 = vmatpush.bf16.msra.mxu0 %v1601
  %2129 = vmatpush.bf16.msra.mxu0 %v1600
  %2130 = vmatpush.bf16.msra.mxu0 %v1599
  %2131 = vmatpush.bf16.msra.mxu0 %v1598
  %2132 = vmatpush.bf16.msra.mxu0 %v1597
  %2133 = vmatpush.bf16.msra.mxu0 %v1596
  %2134 = vmatpush.bf16.msra.mxu0 %v1595
  %2135 = vmatmul.bf16.gmra.mxu0 %v537
  %v2136 = vpop.f32.mrf.mxu0
  %v2137 = vadd.f32 %v2124, %v2136
  %v2138 = vpop.f32.mrf.mxu0
  %2139 = vdwg.mxu0
  %2140 = vmatpush.bf16.msra.mxu0 %v1610
  %2141 = vmatpush.bf16.msra.mxu0 %v1609
  %2142 = vmatpush.bf16.msra.mxu0 %v1608
  %2143 = vmatpush.bf16.msra.mxu0 %v1607
  %2144 = vmatpush.bf16.msra.mxu0 %v1606
  %2145 = vmatpush.bf16.msra.mxu0 %v1605
  %2146 = vmatpush.bf16.msra.mxu0 %v1604
  %2147 = vmatpush.bf16.msra.mxu0 %v1603
  %2148 = vmatmul.bf16.gmra.mxu0 %v538
  %v2149 = vpop.f32.mrf.mxu0
  %v2150 = vadd.f32 %v2137, %v2149
  %v2151 = vpop.f32.mrf.mxu0
  %2152 = vdwg.mxu0
  %2153 = vmatpush.bf16.msra.mxu0 %v1618
  %2154 = vmatpush.bf16.msra.mxu0 %v1617
  %2155 = vmatpush.bf16.msra.mxu0 %v1616
  %2156 = vmatpush.bf16.msra.mxu0 %v1615
  %2157 = vmatpush.bf16.msra.mxu0 %v1614
  %2158 = vmatpush.bf16.msra.mxu0 %v1613
  %2159 = vmatpush.bf16.msra.mxu0 %v1612
  %2160 = vmatpush.bf16.msra.mxu0 %v1611
  %2161 = vmatmul.bf16.gmra.mxu0 %v539
  %v2162 = vpop.f32.mrf.mxu0
  %v2163 = vadd.f32 %v2150, %v2162
  %v2164 = vpop.f32.mrf.mxu0
  %2165 = vdwg.mxu0
  %2166 = vmatpush.bf16.msra.mxu0 %v1626
  %2167 = vmatpush.bf16.msra.mxu0 %v1625
  %2168 = vmatpush.bf16.msra.mxu0 %v1624
  %2169 = vmatpush.bf16.msra.mxu0 %v1623
  %2170 = vmatpush.bf16.msra.mxu0 %v1622
  %2171 = vmatpush.bf16.msra.mxu0 %v1621
  %2172 = vmatpush.bf16.msra.mxu0 %v1620
  %2173 = vmatpush.bf16.msra.mxu0 %v1619
  %2174 = vmatmul.bf16.gmra.mxu0 %v540
  %v2175 = vpop.f32.mrf.mxu0
  %v2176 = vadd.f32 %v2163, %v2175
  %v2177 = vpop.f32.mrf.mxu0
  %2178 = vdwg.mxu0
  %2179 = vmatpush.bf16.msra.mxu0 %v1634
  %2180 = vmatpush.bf16.msra.mxu0 %v1633
  %2181 = vmatpush.bf16.msra.mxu0 %v1632
  %2182 = vmatpush.bf16.msra.mxu0 %v1631
  %2183 = vmatpush.bf16.msra.mxu0 %v1630
  %2184 = vmatpush.bf16.msra.mxu0 %v1629
  %2185 = vmatpush.bf16.msra.mxu0 %v1628
  %2186 = vmatpush.bf16.msra.mxu0 %v1627
  %2187 = vmatmul.bf16.gmra.mxu0 %v541
  %v2188 = vpop.f32.mrf.mxu0
  %v2189 = vadd.f32 %v2176, %v2188
  %v2190 = vpop.f32.mrf.mxu0
  %2191 = vdwg.mxu0
  %2192 = vmatpush.bf16.msra.mxu0 %v1642
  %2193 = vmatpush.bf16.msra.mxu0 %v1641
  %2194 = vmatpush.bf16.msra.mxu0 %v1640
  %2195 = vmatpush.bf16.msra.mxu0 %v1639
  %2196 = vmatpush.bf16.msra.mxu0 %v1638
  %2197 = vmatpush.bf16.msra.mxu0 %v1637
  %2198 = vmatpush.bf16.msra.mxu0 %v1636
  %2199 = vmatpush.bf16.msra.mxu0 %v1635
  %2200 = vmatmul.bf16.gmra.mxu0 %v542
  %v2201 = vpop.f32.mrf.mxu0
  %v2202 = vadd.f32 %v2189, %v2201
  %v2203 = vpop.f32.mrf.mxu0
  %2204 = vdwg.mxu0
  %2205 = vmatpush.bf16.msra.mxu0 %v1650
  %2206 = vmatpush.bf16.msra.mxu0 %v1649
  %2207 = vmatpush.bf16.msra.mxu0 %v1648
  %2208 = vmatpush.bf16.msra.mxu0 %v1647
  %2209 = vmatpush.bf16.msra.mxu0 %v1646
  %2210 = vmatpush.bf16.msra.mxu0 %v1645
  %2211 = vmatpush.bf16.msra.mxu0 %v1644
  %2212 = vmatpush.bf16.msra.mxu0 %v1643
  %2213 = vmatmul.bf16.gmra.mxu0 %v543
  %v2214 = vpop.f32.mrf.mxu0
  %v2215 = vadd.f32 %v2202, %v2214
  %v2216 = vpop.f32.mrf.mxu0
  %2217 = vdwg.mxu0
  %v2218 = vmax.f32 %v2215, 0.0
  %v2219 = vpack.c.bf16 %v2218, %v2218
  %v2220 = vld [vmem:[%s3] sm:$0xf]
  %v2221 = vld [vmem:[%s3 + $0x4] sm:$0xf]
  %v2222 = vld [vmem:[%s3 + $0x8] sm:$0xf]
  %v2223 = vld [vmem:[%s3 + $0xc] sm:$0xf]
  %v2224 = vld [vmem:[%s3 + $0x10] sm:$0xf]
  %v2225 = vld [vmem:[%s3 + $0x14] sm:$0xf]
  %v2226 = vld [vmem:[%s3 + $0x18] sm:$0xf]
  %v2227 = vld [vmem:[%s3 + $0x1c] sm:$0xf]
  %v2228 = vld [vmem:[%s3 + $0x20] sm:$0xf]
  %v2229 = vld [vmem:[%s3 + $0x24] sm:$0xf]
  %v2230 = vld [vmem:[%s3 + $0x28] sm:$0xf]
  %v2231 = vld [vmem:[%s3 + $0x2c] sm:$0xf]
  %v2232 = vld [vmem:[%s3 + $0x30] sm:$0xf]
  %v2233 = vld [vmem:[%s3 + $0x34] sm:$0xf]
  %v2234 = vld [vmem:[%s3 + $0x38] sm:$0xf]
  %v2235 = vld [vmem:[%s3 + $0x3c] sm:$0xf]
  %v2236 = vld [vmem:[%s4] sm:$0x1]
  %v2238 = vperm.slane %v2236, 0
  %v2256 = vunpack.c.l.b16 %v2220
  %v2257 = vunpack.c.l.b16 %v2221
  %v2258 = vunpack.c.l.b16 %v2222
  %v2259 = vunpack.c.l.b16 %v2223
  %v2260 = vunpack.c.l.b16 %v2224
  %v2261 = vunpack.c.l.b16 %v2225
  %v2262 = vunpack.c.l.b16 %v2226
  %v2263 = vunpack.c.l.b16 %v2227
  %v2264 = vunpack.c.l.b16 %v2228
  %v2265 = vunpack.c.l.b16 %v2229
  %v2266 = vunpack.c.l.b16 %v2230
  %v2267 = vunpack.c.l.b16 %v2231
  %v2268 = vunpack.c.l.b16 %v2232
  %v2269 = vunpack.c.l.b16 %v2233
  %v2270 = vunpack.c.l.b16 %v2234
  %v2271 = vunpack.c.l.b16 %v2235
  %v2272 = vpack.c.b16 %v2257, %v2256
  %v2273 = vpack.c.b16 %v2259, %v2258
  %v2274 = vpack.c.b16 %v2261, %v2260
  %v2275 = vpack.c.b16 %v2263, %v2262
  %v2276 = vpack.c.b16 %v2265, %v2264
  %v2277 = vpack.c.b16 %v2267, %v2266
  %v2278 = vpack.c.b16 %v2269, %v2268
  %v2279 = vpack.c.b16 %v2271, %v2270
  %2288 = vmatpush.bf16.msra.mxu0 %v2279
  %2289 = vmatpush.bf16.msra.mxu0 %v2278
  %2290 = vmatpush.bf16.msra.mxu0 %v2277
  %2291 = vmatpush.bf16.msra.mxu0 %v2276
  %2292 = vmatpush.bf16.msra.mxu0 %v2275
  %2293 = vmatpush.bf16.msra.mxu0 %v2274
  %2294 = vmatpush.bf16.msra.mxu0 %v2273
  %2295 = vmatpush.bf16.msra.mxu0 %v2272
  %2296 = vmatmul.bf16.gmra.mxu0 %v2219
  %v2297 = vpop.f32.mrf.mxu0
  %v2298 = vadd.f32 %v2238, %v2297
  %v2299 = vpop.f32.mrf.mxu0
  %2300 = vdwg.mxu0
  %v2301 = vmax.f32 %v2298, 0.0
  %v2302 = vpack.c.bf16 %v2301, %v2301
  %v2303 = vld [vmem:[%s5] sm:$0xf]
  %v2304 = vld [vmem:[%s5 + $0x4] sm:$0xf]
  %v2305 = vld [vmem:[%s5 + $0x8] sm:$0xf]
  %v2306 = vld [vmem:[%s5 + $0xc] sm:$0xf]
  %v2307 = vld [vmem:[%s5 + $0x10] sm:$0xf]
  %v2308 = vld [vmem:[%s5 + $0x14] sm:$0xf]
  %v2309 = vld [vmem:[%s5 + $0x18] sm:$0xf]
  %v2310 = vld [vmem:[%s5 + $0x1c] sm:$0xf]
  %v2311 = vld [vmem:[%s5 + $0x20] sm:$0xf]
  %v2312 = vld [vmem:[%s5 + $0x24] sm:$0xf]
  %v2313 = vld [vmem:[%s5 + $0x28] sm:$0xf]
  %v2314 = vld [vmem:[%s5 + $0x2c] sm:$0xf]
  %v2315 = vld [vmem:[%s5 + $0x30] sm:$0xf]
  %v2316 = vld [vmem:[%s5 + $0x34] sm:$0xf]
  %v2317 = vld [vmem:[%s5 + $0x38] sm:$0xf]
  %v2318 = vld [vmem:[%s5 + $0x3c] sm:$0xf]
  %v2319 = vld [vmem:[%s6] sm:$0x1]
  %v2321 = vperm.slane %v2319, 0
  %v2339 = vunpack.c.l.b16 %v2303
  %v2340 = vunpack.c.l.b16 %v2304
  %v2341 = vunpack.c.l.b16 %v2305
  %v2342 = vunpack.c.l.b16 %v2306
  %v2343 = vunpack.c.l.b16 %v2307
  %v2344 = vunpack.c.l.b16 %v2308
  %v2345 = vunpack.c.l.b16 %v2309
  %v2346 = vunpack.c.l.b16 %v2310
  %v2347 = vunpack.c.l.b16 %v2311
  %v2348 = vunpack.c.l.b16 %v2312
  %v2349 = vunpack.c.l.b16 %v2313
  %v2350 = vunpack.c.l.b16 %v2314
  %v2351 = vunpack.c.l.b16 %v2315
  %v2352 = vunpack.c.l.b16 %v2316
  %v2353 = vunpack.c.l.b16 %v2317
  %v2354 = vunpack.c.l.b16 %v2318
  %v2355 = vpack.c.b16 %v2340, %v2339
  %v2356 = vpack.c.b16 %v2342, %v2341
  %v2357 = vpack.c.b16 %v2344, %v2343
  %v2358 = vpack.c.b16 %v2346, %v2345
  %v2359 = vpack.c.b16 %v2348, %v2347
  %v2360 = vpack.c.b16 %v2350, %v2349
  %v2361 = vpack.c.b16 %v2352, %v2351
  %v2362 = vpack.c.b16 %v2354, %v2353
  %2371 = vmatpush.bf16.msra.mxu0 %v2362
  %2372 = vmatpush.bf16.msra.mxu0 %v2361
  %2373 = vmatpush.bf16.msra.mxu0 %v2360
  %2374 = vmatpush.bf16.msra.mxu0 %v2359
  %2375 = vmatpush.bf16.msra.mxu0 %v2358
  %2376 = vmatpush.bf16.msra.mxu0 %v2357
  %2377 = vmatpush.bf16.msra.mxu0 %v2356
  %2378 = vmatpush.bf16.msra.mxu0 %v2355
  %2379 = vmatmul.bf16.gmra.mxu0 %v2302
  %v2380 = vpop.f32.mrf.mxu0
  %v2381 = vadd.f32 %v2321, %v2380
  %v2382 = vpop.f32.mrf.mxu0
  %2383 = vdwg.mxu0
  %v2384 = vmax.f32 %v2381, 0.0
  %v2385 = vpack.c.bf16 %v2384, %v2384
  %2386 = vst [vmem:[%s7] sm:$0xf] %v2385
  // Predicated region
  $region30: #{net_forward.7} parent=0 // pred_check
    _
  $region31: #{net_forward.7} parent=0 // pred_check_branch
    %2388 = sbr.rel (0) target = $region33
  $region32: #{net_forward.7} parent=0 // pred_region
    _
  $region33: #{net_forward.7} parent=0 // pred_fallthru
    _
  // Predicated region
  $region34: #{net_forward.7} parent=0 // pred_check
    _
  $region35: #{net_forward.7} parent=0 // pred_check_branch
    %2390 = sbr.rel (0) target = $region37
  $region36: #{net_forward.7} parent=0 // pred_region
    _
  $region37: #{net_forward.7} parent=0 // pred_fallthru
    _

// kernel: net_forward.5
$region0: #{net_forward.5}
  #allocation0 [shape = 'u32[]', space=smem, size = 0x4, offset = 0x4, fixed_abs, tag = 'smem constant byte address 0x4 - core index']
  #allocation1 [shape = 'u32[72,128]{1,0:T(1,128)}', space=vmem, size = 0x9000, scoped, tag = 'internal scratch']
  %s0 = inlined_call_operand.vmem [shape: bf16[104,3200], index: 0, kind: input, shape index: {}]
  %s1 = inlined_call_operand.vmem [shape: bf16[3200,256], index: 1, kind: input, shape index: {}]
  %s2 = inlined_call_operand.vmem [shape: f32[1,256], index: 2, kind: input, shape index: {}]
  %s3 = inlined_call_operand.vmem [shape: bf16[256,256], index: 3, kind: input, shape index: {}]
  %s4 = inlined_call_operand.vmem [shape: f32[1,256], index: 4, kind: input, shape index: {}]
  %s5 = inlined_call_operand.vmem [shape: bf16[256,256], index: 5, kind: input, shape index: {}]
  %s6 = inlined_call_operand.vmem [shape: f32[1,256], index: 6, kind: input, shape index: {}]
  %s7 = inlined_call_operand.vmem [shape: bf16[104,256], index: 7, kind: output, shape index: {}]
  %s8 = sld [smem:[#allocation0]]
  $region38: #{net_forward.5} parent=0
    _
  %s10 = ssub.s32 1, %s8
  %s11 = scalar_select 0, %s10, %s8
  // Predicated region
  $region2: #{net_forward.5} parent=0 // pred_check
    _
  $region3: #{net_forward.5} parent=0 // pred_check_branch
    %13 = sbr.rel (0) target = $region5
  $region4: #{net_forward.5} parent=0 // pred_region
    _
  $region5: #{net_forward.5} parent=0 // pred_fallthru
    _
  // Predicated region
  $region6: #{net_forward.5} parent=0 // pred_check
    _
  $region7: #{net_forward.5} parent=0 // pred_check_branch
    %15 = sbr.rel (0) target = $region9
  $region8: #{net_forward.5} parent=0 // pred_region
    _
  $region9: #{net_forward.5} parent=0 // pred_fallthru
    _
  // Predicated region
  $region10: #{net_forward.5} parent=0 // pred_check
    _
  $region11: #{net_forward.5} parent=0 // pred_check_branch
    %17 = sbr.rel (0) target = $region13
  $region12: #{net_forward.5} parent=0 // pred_region
    _
  $region13: #{net_forward.5} parent=0 // pred_fallthru
    _
  // Predicated region
  $region14: #{net_forward.5} parent=0 // pred_check
    _
  $region15: #{net_forward.5} parent=0 // pred_check_branch
    %19 = sbr.rel (0) target = $region17
  $region16: #{net_forward.5} parent=0 // pred_region
    _
  $region17: #{net_forward.5} parent=0 // pred_fallthru
    _
  // Predicated region
  $region18: #{net_forward.5} parent=0 // pred_check
    _
  $region19: #{net_forward.5} parent=0 // pred_check_branch
    %21 = sbr.rel (0) target = $region21
  $region20: #{net_forward.5} parent=0 // pred_region
    _
  $region21: #{net_forward.5} parent=0 // pred_fallthru
    _
  // Predicated region
  $region22: #{net_forward.5} parent=0 // pred_check
    _
  $region23: #{net_forward.5} parent=0 // pred_check_branch
    %23 = sbr.rel (0) target = $region25
  $region24: #{net_forward.5} parent=0 // pred_region
    _
  $region25: #{net_forward.5} parent=0 // pred_fallthru
    _
  // Predicated region
  $region26: #{net_forward.5} parent=0 // pred_check
    _
  $region27: #{net_forward.5} parent=0 // pred_check_branch
    %25 = sbr.rel (0) target = $region29
  $region28: #{net_forward.5} parent=0 // pred_region
    _
  $region29: #{net_forward.5} parent=0 // pred_fallthru
    _
  %v26 = vld [vmem:[%s0] sm:$0xff]
  %v27 = vld [vmem:[%s0 + $0x8] sm:$0xff]
  %v28 = vld [vmem:[%s0 + $0x10] sm:$0xff]
  %v29 = vld [vmem:[%s0 + $0x18] sm:$0xff]
  %v30 = vld [vmem:[%s0 + $0x20] sm:$0xff]
  %v31 = vld [vmem:[%s0 + $0x28] sm:$0xff]
  %v32 = vld [vmem:[%s0 + $0x30] sm:$0xff]
  %v33 = vld [vmem:[%s0 + $0x38] sm:$0xff]
  %v34 = vld [vmem:[%s0 + $0x40] sm:$0xff]
  %v35 = vld [vmem:[%s0 + $0x48] sm:$0xff]
  %v36 = vld [vmem:[%s0 + $0x50] sm:$0xff]
  %v37 = vld [vmem:[%s0 + $0x58] sm:$0xff]
  %v38 = vld [vmem:[%s0 + $0x60] sm:$0xf]
  %v39 = vld [vmem:[%s0 + $0x64] sm:$0xff]
  %v40 = vld [vmem:[%s0 + $0x6c] sm:$0xff]
  %v41 = vld [vmem:[%s0 + $0x74] sm:$0xff]
  %v42 = vld [vmem:[%s0 + $0x7c] sm:$0xff]
  %v43 = vld [vmem:[%s0 + $0x84] sm:$0xff]
  %v44 = vld [vmem:[%s0 + $0x8c] sm:$0xff]
  %v45 = vld [vmem:[%s0 + $0x94] sm:$0xff]
  %v46 = vld [vmem:[%s0 + $0x9c] sm:$0xff]
  %v47 = vld [vmem:[%s0 + $0xa4] sm:$0xff]
  %v48 = vld [vmem:[%s0 + $0xac] sm:$0xff]
  %v49 = vld [vmem:[%s0 + $0xb4] sm:$0xff]
  %v50 = vld [vmem:[%s0 + $0xbc] sm:$0xff]
  %v51 = vld [vmem:[%s0 + $0xc4] sm:$0xf]
  %v52 = vld [vmem:[%s0 + $0xc8] sm:$0xff]
  %v53 = vld [vmem:[%s0 + $0xd0] sm:$0xff]
  %v54 = vld [vmem:[%s0 + $0xd8] sm:$0xff]
  %v55 = vld [vmem:[%s0 + $0xe0] sm:$0xff]
  %v56 = vld [vmem:[%s0 + $0xe8] sm:$0xff]
  %v57 = vld [vmem:[%s0 + $0xf0] sm:$0xff]
  %v58 = vld [vmem:[%s0 + $0xf8] sm:$0xff]
  %v59 = vld [vmem:[%s0 + $0x100] sm:$0xff]
  %v60 = vld [vmem:[%s0 + $0x108] sm:$0xff]
  %v61 = vld [vmem:[%s0 + $0x110] sm:$0xff]
  %v62 = vld [vmem:[%s0 + $0x118] sm:$0xff]
  %v63 = vld [vmem:[%s0 + $0x120] sm:$0xff]
  %v64 = vld [vmem:[%s0 + $0x128] sm:$0xf]
  %v65 = vld [vmem:[%s0 + $0x12c] sm:$0xff]
  %v66 = vld [vmem:[%s0 + $0x134] sm:$0xff]
  %v67 = vld [vmem:[%s0 + $0x13c] sm:$0xff]
  %v68 = vld [vmem:[%s0 + $0x144] sm:$0xff]
  %v69 = vld [vmem:[%s0 + $0x14c] sm:$0xff]
  %v70 = vld [vmem:[%s0 + $0x154] sm:$0xff]
  %v71 = vld [vmem:[%s0 + $0x15c] sm:$0xff]
  %v72 = vld [vmem:[%s0 + $0x164] sm:$0xff]
  %v73 = vld [vmem:[%s0 + $0x16c] sm:$0xff]
  %v74 = vld [vmem:[%s0 + $0x174] sm:$0xff]
  %v75 = vld [vmem:[%s0 + $0x17c] sm:$0xff]
  %v76 = vld [vmem:[%s0 + $0x184] sm:$0xff]
  %v77 = vld [vmem:[%s0 + $0x18c] sm:$0xf]
  %v78 = vld [vmem:[%s0 + $0x190] sm:$0xff]
  %v79 = vld [vmem:[%s0 + $0x198] sm:$0xff]
  %v80 = vld [vmem:[%s0 + $0x1a0] sm:$0xff]
  %v81 = vld [vmem:[%s0 + $0x1a8] sm:$0xff]
  %v82 = vld [vmem:[%s0 + $0x1b0] sm:$0xff]
  %v83 = vld [vmem:[%s0 + $0x1b8] sm:$0xff]
  %v84 = vld [vmem:[%s0 + $0x1c0] sm:$0xff]
  %v85 = vld [vmem:[%s0 + $0x1c8] sm:$0xff]
  %v86 = vld [vmem:[%s0 + $0x1d0] sm:$0xff]
  %v87 = vld [vmem:[%s0 + $0x1d8] sm:$0xff]
  %v88 = vld [vmem:[%s0 + $0x1e0] sm:$0xff]
  %v89 = vld [vmem:[%s0 + $0x1e8] sm:$0xff]
  %v90 = vld [vmem:[%s0 + $0x1f0] sm:$0xf]
  %v91 = vld [vmem:[%s0 + $0x1f4] sm:$0xff]
  %v92 = vld [vmem:[%s0 + $0x1fc] sm:$0xff]
  %v93 = vld [vmem:[%s0 + $0x204] sm:$0xff]
  %v94 = vld [vmem:[%s0 + $0x20c] sm:$0xff]
  %v95 = vld [vmem:[%s0 + $0x214] sm:$0xff]
  %v96 = vld [vmem:[%s0 + $0x21c] sm:$0xff]
  %v97 = vld [vmem:[%s0 + $0x224] sm:$0xff]
  %v98 = vld [vmem:[%s0 + $0x22c] sm:$0xff]
  %v99 = vld [vmem:[%s0 + $0x234] sm:$0xff]
  %v100 = vld [vmem:[%s0 + $0x23c] sm:$0xff]
  %v101 = vld [vmem:[%s0 + $0x244] sm:$0xff]
  %v102 = vld [vmem:[%s0 + $0x24c] sm:$0xff]
  %v103 = vld [vmem:[%s0 + $0x254] sm:$0xf]
  %v104 = vld [vmem:[%s0 + $0x258] sm:$0xff]
  %v105 = vld [vmem:[%s0 + $0x260] sm:$0xff]
  %v106 = vld [vmem:[%s0 + $0x268] sm:$0xff]
  %v107 = vld [vmem:[%s0 + $0x270] sm:$0xff]
  %v108 = vld [vmem:[%s0 + $0x278] sm:$0xff]
  %v109 = vld [vmem:[%s0 + $0x280] sm:$0xff]
  %v110 = vld [vmem:[%s0 + $0x288] sm:$0xff]
  %v111 = vld [vmem:[%s0 + $0x290] sm:$0xff]
  %v112 = vld [vmem:[%s0 + $0x298] sm:$0xff]
  %v113 = vld [vmem:[%s0 + $0x2a0] sm:$0xff]
  %v114 = vld [vmem:[%s0 + $0x2a8] sm:$0xff]
  %v115 = vld [vmem:[%s0 + $0x2b0] sm:$0xff]
  %v116 = vld [vmem:[%s0 + $0x2b8] sm:$0xf]
  %v117 = vld [vmem:[%s0 + $0x2bc] sm:$0xff]
  %v118 = vld [vmem:[%s0 + $0x2c4] sm:$0xff]
  %v119 = vld [vmem:[%s0 + $0x2cc] sm:$0xff]
  %v120 = vld [vmem:[%s0 + $0x2d4] sm:$0xff]
  %v121 = vld [vmem:[%s0 + $0x2dc] sm:$0xff]
  %v122 = vld [vmem:[%s0 + $0x2e4] sm:$0xff]
  %v123 = vld [vmem:[%s0 + $0x2ec] sm:$0xff]
  %v124 = vld [vmem:[%s0 + $0x2f4] sm:$0xff]
  %v125 = vld [vmem:[%s0 + $0x2fc] sm:$0xff]
  %v126 = vld [vmem:[%s0 + $0x304] sm:$0xff]
  %v127 = vld [vmem:[%s0 + $0x30c] sm:$0xff]
  %v128 = vld [vmem:[%s0 + $0x314] sm:$0xff]
  %v129 = vld [vmem:[%s0 + $0x31c] sm:$0xf]
  %v130 = vld [vmem:[%s0 + $0x320] sm:$0xff]
  %v131 = vld [vmem:[%s0 + $0x328] sm:$0xff]
  %v132 = vld [vmem:[%s0 + $0x330] sm:$0xff]
  %v133 = vld [vmem:[%s0 + $0x338] sm:$0xff]
  %v134 = vld [vmem:[%s0 + $0x340] sm:$0xff]
  %v135 = vld [vmem:[%s0 + $0x348] sm:$0xff]
  %v136 = vld [vmem:[%s0 + $0x350] sm:$0xff]
  %v137 = vld [vmem:[%s0 + $0x358] sm:$0xff]
  %v138 = vld [vmem:[%s0 + $0x360] sm:$0xff]
  %v139 = vld [vmem:[%s0 + $0x368] sm:$0xff]
  %v140 = vld [vmem:[%s0 + $0x370] sm:$0xff]
  %v141 = vld [vmem:[%s0 + $0x378] sm:$0xff]
  %v142 = vld [vmem:[%s0 + $0x380] sm:$0xf]
  %v143 = vld [vmem:[%s0 + $0x384] sm:$0xff]
  %v144 = vld [vmem:[%s0 + $0x38c] sm:$0xff]
  %v145 = vld [vmem:[%s0 + $0x394] sm:$0xff]
  %v146 = vld [vmem:[%s0 + $0x39c] sm:$0xff]
  %v147 = vld [vmem:[%s0 + $0x3a4] sm:$0xff]
  %v148 = vld [vmem:[%s0 + $0x3ac] sm:$0xff]
  %v149 = vld [vmem:[%s0 + $0x3b4] sm:$0xff]
  %v150 = vld [vmem:[%s0 + $0x3bc] sm:$0xff]
  %v151 = vld [vmem:[%s0 + $0x3c4] sm:$0xff]
  %v152 = vld [vmem:[%s0 + $0x3cc] sm:$0xff]
  %v153 = vld [vmem:[%s0 + $0x3d4] sm:$0xff]
  %v154 = vld [vmem:[%s0 + $0x3dc] sm:$0xff]
  %v155 = vld [vmem:[%s0 + $0x3e4] sm:$0xf]
  %v156 = vld [vmem:[%s0 + $0x3e8] sm:$0xff]
  %v157 = vld [vmem:[%s0 + $0x3f0] sm:$0xff]
  %v158 = vld [vmem:[%s0 + $0x3f8] sm:$0xff]
  %v159 = vld [vmem:[%s0 + $0x400] sm:$0xff]
  %v160 = vld [vmem:[%s0 + $0x408] sm:$0xff]
  %v161 = vld [vmem:[%s0 + $0x410] sm:$0xff]
  %v162 = vld [vmem:[%s0 + $0x418] sm:$0xff]
  %v163 = vld [vmem:[%s0 + $0x420] sm:$0xff]
  %v164 = vld [vmem:[%s0 + $0x428] sm:$0xff]
  %v165 = vld [vmem:[%s0 + $0x430] sm:$0xff]
  %v166 = vld [vmem:[%s0 + $0x438] sm:$0xff]
  %v167 = vld [vmem:[%s0 + $0x440] sm:$0xff]
  %v168 = vld [vmem:[%s0 + $0x448] sm:$0xf]
  %v169 = vld [vmem:[%s0 + $0x44c] sm:$0xff]
  %v170 = vld [vmem:[%s0 + $0x454] sm:$0xff]
  %v171 = vld [vmem:[%s0 + $0x45c] sm:$0xff]
  %v172 = vld [vmem:[%s0 + $0x464] sm:$0xff]
  %v173 = vld [vmem:[%s0 + $0x46c] sm:$0xff]
  %v174 = vld [vmem:[%s0 + $0x474] sm:$0xff]
  %v175 = vld [vmem:[%s0 + $0x47c] sm:$0xff]
  %v176 = vld [vmem:[%s0 + $0x484] sm:$0xff]
  %v177 = vld [vmem:[%s0 + $0x48c] sm:$0xff]
  %v178 = vld [vmem:[%s0 + $0x494] sm:$0xff]
  %v179 = vld [vmem:[%s0 + $0x49c] sm:$0xff]
  %v180 = vld [vmem:[%s0 + $0x4a4] sm:$0xff]
  %v181 = vld [vmem:[%s0 + $0x4ac] sm:$0xf]
  %v182 = vld [vmem:[%s0 + $0x4b0] sm:$0xff]
  %v183 = vld [vmem:[%s0 + $0x4b8] sm:$0xff]
  %v184 = vld [vmem:[%s0 + $0x4c0] sm:$0xff]
  %v185 = vld [vmem:[%s0 + $0x4c8] sm:$0xff]
  %v186 = vld [vmem:[%s0 + $0x4d0] sm:$0xff]
  %v187 = vld [vmem:[%s0 + $0x4d8] sm:$0xff]
  %v188 = vld [vmem:[%s0 + $0x4e0] sm:$0xff]
  %v189 = vld [vmem:[%s0 + $0x4e8] sm:$0xff]
  %v190 = vld [vmem:[%s0 + $0x4f0] sm:$0xff]
  %v191 = vld [vmem:[%s0 + $0x4f8] sm:$0xff]
  %v192 = vld [vmem:[%s0 + $0x500] sm:$0xff]
  %v193 = vld [vmem:[%s0 + $0x508] sm:$0xff]
  %v194 = vld [vmem:[%s0 + $0x510] sm:$0xf]
  %v195 = vld [vmem:[%s1] sm:$0xff]
  %v196 = vld [vmem:[%s1 + $0x8] sm:$0xff]
  %v197 = vld [vmem:[%s1 + $0x10] sm:$0xff]
  %v198 = vld [vmem:[%s1 + $0x18] sm:$0xff]
  %v199 = vld [vmem:[%s1 + $0x20] sm:$0xff]
  %v200 = vld [vmem:[%s1 + $0x28] sm:$0xff]
  %v201 = vld [vmem:[%s1 + $0x30] sm:$0xff]
  %v202 = vld [vmem:[%s1 + $0x38] sm:$0xff]
  %v203 = vld [vmem:[%s1 + $0x40] sm:$0xff]
  %v204 = vld [vmem:[%s1 + $0x48] sm:$0xff]
  %v205 = vld [vmem:[%s1 + $0x50] sm:$0xff]
  %v206 = vld [vmem:[%s1 + $0x58] sm:$0xff]
  %v207 = vld [vmem:[%s1 + $0x60] sm:$0xff]
  %v208 = vld [vmem:[%s1 + $0x68] sm:$0xff]
  %v209 = vld [vmem:[%s1 + $0x70] sm:$0xff]
  %v210 = vld [vmem:[%s1 + $0x78] sm:$0xff]
  %v211 = vld [vmem:[%s1 + $0x80] sm:$0xff]
  %v212 = vld [vmem:[%s1 + $0x88] sm:$0xff]
  %v213 = vld [vmem:[%s1 + $0x90] sm:$0xff]
  %v214 = vld [vmem:[%s1 + $0x98] sm:$0xff]
  %v215 = vld [vmem:[%s1 + $0xa0] sm:$0xff]
  %v216 = vld [vmem:[%s1 + $0xa8] sm:$0xff]
  %v217 = vld [vmem:[%s1 + $0xb0] sm:$0xff]
  %v218 = vld [vmem:[%s1 + $0xb8] sm:$0xff]
  %v219 = vld [vmem:[%s1 + $0xc0] sm:$0xff]
  %v220 = vld [vmem:[%s1 + $0xc8] sm:$0xff]
  %v221 = vld [vmem:[%s1 + $0xd0] sm:$0xff]
  %v222 = vld [vmem:[%s1 + $0xd8] sm:$0xff]
  %v223 = vld [vmem:[%s1 + $0xe0] sm:$0xff]
  %v224 = vld [vmem:[%s1 + $0xe8] sm:$0xff]
  %v225 = vld [vmem:[%s1 + $0xf0] sm:$0xff]
  %v226 = vld [vmem:[%s1 + $0xf8] sm:$0xff]
  %v227 = vld [vmem:[%s1 + $0x100] sm:$0xff]
  %v228 = vld [vmem:[%s1 + $0x108] sm:$0xff]
  %v229 = vld [vmem:[%s1 + $0x110] sm:$0xff]
  %v230 = vld [vmem:[%s1 + $0x118] sm:$0xff]
  %v231 = vld [vmem:[%s1 + $0x120] sm:$0xff]
  %v232 = vld [vmem:[%s1 + $0x128] sm:$0xff]
  %v233 = vld [vmem:[%s1 + $0x130] sm:$0xff]
  %v234 = vld [vmem:[%s1 + $0x138] sm:$0xff]
  %v235 = vld [vmem:[%s1 + $0x140] sm:$0xff]
  %v236 = vld [vmem:[%s1 + $0x148] sm:$0xff]
  %v237 = vld [vmem:[%s1 + $0x150] sm:$0xff]
  %v238 = vld [vmem:[%s1 + $0x158] sm:$0xff]
  %v239 = vld [vmem:[%s1 + $0x160] sm:$0xff]
  %v240 = vld [vmem:[%s1 + $0x168] sm:$0xff]
  %v241 = vld [vmem:[%s1 + $0x170] sm:$0xff]
  %v242 = vld [vmem:[%s1 + $0x178] sm:$0xff]
  %v243 = vld [vmem:[%s1 + $0x180] sm:$0xff]
  %v244 = vld [vmem:[%s1 + $0x188] sm:$0xff]
  %v245 = vld [vmem:[%s1 + $0x190] sm:$0xff]
  %v246 = vld [vmem:[%s1 + $0x198] sm:$0xff]
  %v247 = vld [vmem:[%s1 + $0x1a0] sm:$0xff]
  %v248 = vld [vmem:[%s1 + $0x1a8] sm:$0xff]
  %v249 = vld [vmem:[%s1 + $0x1b0] sm:$0xff]
  %v250 = vld [vmem:[%s1 + $0x1b8] sm:$0xff]
  %v251 = vld [vmem:[%s1 + $0x1c0] sm:$0xff]
  %v252 = vld [vmem:[%s1 + $0x1c8] sm:$0xff]
  %v253 = vld [vmem:[%s1 + $0x1d0] sm:$0xff]
  %v254 = vld [vmem:[%s1 + $0x1d8] sm:$0xff]
  %v255 = vld [vmem:[%s1 + $0x1e0] sm:$0xff]
  %v256 = vld [vmem:[%s1 + $0x1e8] sm:$0xff]
  %v257 = vld [vmem:[%s1 + $0x1f0] sm:$0xff]
  %v258 = vld [vmem:[%s1 + $0x1f8] sm:$0xff]
  %v259 = vld [vmem:[%s1 + $0x200] sm:$0xff]
  %v260 = vld [vmem:[%s1 + $0x208] sm:$0xff]
  %v261 = vld [vmem:[%s1 + $0x210] sm:$0xff]
  %v262 = vld [vmem:[%s1 + $0x218] sm:$0xff]
  %v263 = vld [vmem:[%s1 + $0x220] sm:$0xff]
  %v264 = vld [vmem:[%s1 + $0x228] sm:$0xff]
  %v265 = vld [vmem:[%s1 + $0x230] sm:$0xff]
  %v266 = vld [vmem:[%s1 + $0x238] sm:$0xff]
  %v267 = vld [vmem:[%s1 + $0x240] sm:$0xff]
  %v268 = vld [vmem:[%s1 + $0x248] sm:$0xff]
  %v269 = vld [vmem:[%s1 + $0x250] sm:$0xff]
  %v270 = vld [vmem:[%s1 + $0x258] sm:$0xff]
  %v271 = vld [vmem:[%s1 + $0x260] sm:$0xff]
  %v272 = vld [vmem:[%s1 + $0x268] sm:$0xff]
  %v273 = vld [vmem:[%s1 + $0x270] sm:$0xff]
  %v274 = vld [vmem:[%s1 + $0x278] sm:$0xff]
  %v275 = vld [vmem:[%s1 + $0x280] sm:$0xff]
  %v276 = vld [vmem:[%s1 + $0x288] sm:$0xff]
  %v277 = vld [vmem:[%s1 + $0x290] sm:$0xff]
  %v278 = vld [vmem:[%s1 + $0x298] sm:$0xff]
  %v279 = vld [vmem:[%s1 + $0x2a0] sm:$0xff]
  %v280 = vld [vmem:[%s1 + $0x2a8] sm:$0xff]
  %v281 = vld [vmem:[%s1 + $0x2b0] sm:$0xff]
  %v282 = vld [vmem:[%s1 + $0x2b8] sm:$0xff]
  %v283 = vld [vmem:[%s1 + $0x2c0] sm:$0xff]
  %v284 = vld [vmem:[%s1 + $0x2c8] sm:$0xff]
  %v285 = vld [vmem:[%s1 + $0x2d0] sm:$0xff]
  %v286 = vld [vmem:[%s1 + $0x2d8] sm:$0xff]
  %v287 = vld [vmem:[%s1 + $0x2e0] sm:$0xff]
  %v288 = vld [vmem:[%s1 + $0x2e8] sm:$0xff]
  %v289 = vld [vmem:[%s1 + $0x2f0] sm:$0xff]
  %v290 = vld [vmem:[%s1 + $0x2f8] sm:$0xff]
  %v291 = vld [vmem:[%s1 + $0x300] sm:$0xff]
  %v292 = vld [vmem:[%s1 + $0x308] sm:$0xff]
  %v293 = vld [vmem:[%s1 + $0x310] sm:$0xff]
  %v294 = vld [vmem:[%s1 + $0x318] sm:$0xff]
  %v295 = vld [vmem:[%s1 + $0x320] sm:$0xff]
  %v296 = vld [vmem:[%s1 + $0x328] sm:$0xff]
  %v297 = vld [vmem:[%s1 + $0x330] sm:$0xff]
  %v298 = vld [vmem:[%s1 + $0x338] sm:$0xff]
  %v299 = vld [vmem:[%s1 + $0x340] sm:$0xff]
  %v300 = vld [vmem:[%s1 + $0x348] sm:$0xff]
  %v301 = vld [vmem:[%s1 + $0x350] sm:$0xff]
  %v302 = vld [vmem:[%s1 + $0x358] sm:$0xff]
  %v303 = vld [vmem:[%s1 + $0x360] sm:$0xff]
  %v304 = vld [vmem:[%s1 + $0x368] sm:$0xff]
  %v305 = vld [vmem:[%s1 + $0x370] sm:$0xff]
  %v306 = vld [vmem:[%s1 + $0x378] sm:$0xff]
  %v307 = vld [vmem:[%s1 + $0x380] sm:$0xff]
  %v308 = vld [vmem:[%s1 + $0x388] sm:$0xff]
  %v309 = vld [vmem:[%s1 + $0x390] sm:$0xff]
  %v310 = vld [vmem:[%s1 + $0x398] sm:$0xff]
  %v311 = vld [vmem:[%s1 + $0x3a0] sm:$0xff]
  %v312 = vld [vmem:[%s1 + $0x3a8] sm:$0xff]
  %v313 = vld [vmem:[%s1 + $0x3b0] sm:$0xff]
  %v314 = vld [vmem:[%s1 + $0x3b8] sm:$0xff]
  %v315 = vld [vmem:[%s1 + $0x3c0] sm:$0xff]
  %v316 = vld [vmem:[%s1 + $0x3c8] sm:$0xff]
  %v317 = vld [vmem:[%s1 + $0x3d0] sm:$0xff]
  %v318 = vld [vmem:[%s1 + $0x3d8] sm:$0xff]
  %v319 = vld [vmem:[%s1 + $0x3e0] sm:$0xff]
  %v320 = vld [vmem:[%s1 + $0x3e8] sm:$0xff]
  %v321 = vld [vmem:[%s1 + $0x3f0] sm:$0xff]
  %v322 = vld [vmem:[%s1 + $0x3f8] sm:$0xff]
  %v323 = vld [vmem:[%s1 + $0x400] sm:$0xff]
  %v324 = vld [vmem:[%s1 + $0x408] sm:$0xff]
  %v325 = vld [vmem:[%s1 + $0x410] sm:$0xff]
  %v326 = vld [vmem:[%s1 + $0x418] sm:$0xff]
  %v327 = vld [vmem:[%s1 + $0x420] sm:$0xff]
  %v328 = vld [vmem:[%s1 + $0x428] sm:$0xff]
  %v329 = vld [vmem:[%s1 + $0x430] sm:$0xff]
  %v330 = vld [vmem:[%s1 + $0x438] sm:$0xff]
  %v331 = vld [vmem:[%s1 + $0x440] sm:$0xff]
  %v332 = vld [vmem:[%s1 + $0x448] sm:$0xff]
  %v333 = vld [vmem:[%s1 + $0x450] sm:$0xff]
  %v334 = vld [vmem:[%s1 + $0x458] sm:$0xff]
  %v335 = vld [vmem:[%s1 + $0x460] sm:$0xff]
  %v336 = vld [vmem:[%s1 + $0x468] sm:$0xff]
  %v337 = vld [vmem:[%s1 + $0x470] sm:$0xff]
  %v338 = vld [vmem:[%s1 + $0x478] sm:$0xff]
  %v339 = vld [vmem:[%s1 + $0x480] sm:$0xff]
  %v340 = vld [vmem:[%s1 + $0x488] sm:$0xff]
  %v341 = vld [vmem:[%s1 + $0x490] sm:$0xff]
  %v342 = vld [vmem:[%s1 + $0x498] sm:$0xff]
  %v343 = vld [vmem:[%s1 + $0x4a0] sm:$0xff]
  %v344 = vld [vmem:[%s1 + $0x4a8] sm:$0xff]
  %v345 = vld [vmem:[%s1 + $0x4b0] sm:$0xff]
  %v346 = vld [vmem:[%s1 + $0x4b8] sm:$0xff]
  %v347 = vld [vmem:[%s1 + $0x4c0] sm:$0xff]
  %v348 = vld [vmem:[%s1 + $0x4c8] sm:$0xff]
  %v349 = vld [vmem:[%s1 + $0x4d0] sm:$0xff]
  %v350 = vld [vmem:[%s1 + $0x4d8] sm:$0xff]
  %v351 = vld [vmem:[%s1 + $0x4e0] sm:$0xff]
  %v352 = vld [vmem:[%s1 + $0x4e8] sm:$0xff]
  %v353 = vld [vmem:[%s1 + $0x4f0] sm:$0xff]
  %v354 = vld [vmem:[%s1 + $0x4f8] sm:$0xff]
  %v355 = vld [vmem:[%s1 + $0x500] sm:$0xff]
  %v356 = vld [vmem:[%s1 + $0x508] sm:$0xff]
  %v357 = vld [vmem:[%s1 + $0x510] sm:$0xff]
  %v358 = vld [vmem:[%s1 + $0x518] sm:$0xff]
  %v359 = vld [vmem:[%s1 + $0x520] sm:$0xff]
  %v360 = vld [vmem:[%s1 + $0x528] sm:$0xff]
  %v361 = vld [vmem:[%s1 + $0x530] sm:$0xff]
  %v362 = vld [vmem:[%s1 + $0x538] sm:$0xff]
  %v363 = vld [vmem:[%s1 + $0x540] sm:$0xff]
  %v364 = vld [vmem:[%s1 + $0x548] sm:$0xff]
  %v365 = vld [vmem:[%s1 + $0x550] sm:$0xff]
  %v366 = vld [vmem:[%s1 + $0x558] sm:$0xff]
  %v367 = vld [vmem:[%s1 + $0x560] sm:$0xff]
  %v368 = vld [vmem:[%s1 + $0x568] sm:$0xff]
  %v369 = vld [vmem:[%s1 + $0x570] sm:$0xff]
  %v370 = vld [vmem:[%s1 + $0x578] sm:$0xff]
  %v371 = vld [vmem:[%s1 + $0x580] sm:$0xff]
  %v372 = vld [vmem:[%s1 + $0x588] sm:$0xff]
  %v373 = vld [vmem:[%s1 + $0x590] sm:$0xff]
  %v374 = vld [vmem:[%s1 + $0x598] sm:$0xff]
  %v375 = vld [vmem:[%s1 + $0x5a0] sm:$0xff]
  %v376 = vld [vmem:[%s1 + $0x5a8] sm:$0xff]
  %v377 = vld [vmem:[%s1 + $0x5b0] sm:$0xff]
  %v378 = vld [vmem:[%s1 + $0x5b8] sm:$0xff]
  %v379 = vld [vmem:[%s1 + $0x5c0] sm:$0xff]
  %v380 = vld [vmem:[%s1 + $0x5c8] sm:$0xff]
  %v381 = vld [vmem:[%s1 + $0x5d0] sm:$0xff]
  %v382 = vld [vmem:[%s1 + $0x5d8] sm:$0xff]
  %v383 = vld [vmem:[%s1 + $0x5e0] sm:$0xff]
  %v384 = vld [vmem:[%s1 + $0x5e8] sm:$0xff]
  %v385 = vld [vmem:[%s1 + $0x5f0] sm:$0xff]
  %v386 = vld [vmem:[%s1 + $0x5f8] sm:$0xff]
  %v387 = vld [vmem:[%s1 + $0x600] sm:$0xff]
  %v388 = vld [vmem:[%s1 + $0x608] sm:$0xff]
  %v389 = vld [vmem:[%s1 + $0x610] sm:$0xff]
  %v390 = vld [vmem:[%s1 + $0x618] sm:$0xff]
  %v391 = vld [vmem:[%s1 + $0x620] sm:$0xff]
  %v392 = vld [vmem:[%s1 + $0x628] sm:$0xff]
  %v393 = vld [vmem:[%s1 + $0x630] sm:$0xff]
  %v394 = vld [vmem:[%s1 + $0x638] sm:$0xff]
  %v395 = vld [vmem:[%s1 + $0x640] sm:$0xff]
  %v396 = vld [vmem:[%s1 + $0x648] sm:$0xff]
  %v397 = vld [vmem:[%s1 + $0x650] sm:$0xff]
  %v398 = vld [vmem:[%s1 + $0x658] sm:$0xff]
  %v399 = vld [vmem:[%s1 + $0x660] sm:$0xff]
  %v400 = vld [vmem:[%s1 + $0x668] sm:$0xff]
  %v401 = vld [vmem:[%s1 + $0x670] sm:$0xff]
  %v402 = vld [vmem:[%s1 + $0x678] sm:$0xff]
  %v403 = vld [vmem:[%s1 + $0x680] sm:$0xff]
  %v404 = vld [vmem:[%s1 + $0x688] sm:$0xff]
  %v405 = vld [vmem:[%s1 + $0x690] sm:$0xff]
  %v406 = vld [vmem:[%s1 + $0x698] sm:$0xff]
  %v407 = vld [vmem:[%s1 + $0x6a0] sm:$0xff]
  %v408 = vld [vmem:[%s1 + $0x6a8] sm:$0xff]
  %v409 = vld [vmem:[%s1 + $0x6b0] sm:$0xff]
  %v410 = vld [vmem:[%s1 + $0x6b8] sm:$0xff]
  %v411 = vld [vmem:[%s1 + $0x6c0] sm:$0xff]
  %v412 = vld [vmem:[%s1 + $0x6c8] sm:$0xff]
  %v413 = vld [vmem:[%s1 + $0x6d0] sm:$0xff]
  %v414 = vld [vmem:[%s1 + $0x6d8] sm:$0xff]
  %v415 = vld [vmem:[%s1 + $0x6e0] sm:$0xff]
  %v416 = vld [vmem:[%s1 + $0x6e8] sm:$0xff]
  %v417 = vld [vmem:[%s1 + $0x6f0] sm:$0xff]
  %v418 = vld [vmem:[%s1 + $0x6f8] sm:$0xff]
  %v419 = vld [vmem:[%s1 + $0x700] sm:$0xff]
  %v420 = vld [vmem:[%s1 + $0x708] sm:$0xff]
  %v421 = vld [vmem:[%s1 + $0x710] sm:$0xff]
  %v422 = vld [vmem:[%s1 + $0x718] sm:$0xff]
  %v423 = vld [vmem:[%s1 + $0x720] sm:$0xff]
  %v424 = vld [vmem:[%s1 + $0x728] sm:$0xff]
  %v425 = vld [vmem:[%s1 + $0x730] sm:$0xff]
  %v426 = vld [vmem:[%s1 + $0x738] sm:$0xff]
  %v427 = vld [vmem:[%s1 + $0x740] sm:$0xff]
  %v428 = vld [vmem:[%s1 + $0x748] sm:$0xff]
  %v429 = vld [vmem:[%s1 + $0x750] sm:$0xff]
  %v430 = vld [vmem:[%s1 + $0x758] sm:$0xff]
  %v431 = vld [vmem:[%s1 + $0x760] sm:$0xff]
  %v432 = vld [vmem:[%s1 + $0x768] sm:$0xff]
  %v433 = vld [vmem:[%s1 + $0x770] sm:$0xff]
  %v434 = vld [vmem:[%s1 + $0x778] sm:$0xff]
  %v435 = vld [vmem:[%s1 + $0x780] sm:$0xff]
  %v436 = vld [vmem:[%s1 + $0x788] sm:$0xff]
  %v437 = vld [vmem:[%s1 + $0x790] sm:$0xff]
  %v438 = vld [vmem:[%s1 + $0x798] sm:$0xff]
  %v439 = vld [vmem:[%s1 + $0x7a0] sm:$0xff]
  %v440 = vld [vmem:[%s1 + $0x7a8] sm:$0xff]
  %v441 = vld [vmem:[%s1 + $0x7b0] sm:$0xff]
  %v442 = vld [vmem:[%s1 + $0x7b8] sm:$0xff]
  %v443 = vld [vmem:[%s1 + $0x7c0] sm:$0xff]
  %v444 = vld [vmem:[%s1 + $0x7c8] sm:$0xff]
  %v445 = vld [vmem:[%s1 + $0x7d0] sm:$0xff]
  %v446 = vld [vmem:[%s1 + $0x7d8] sm:$0xff]
  %v447 = vld [vmem:[%s1 + $0x7e0] sm:$0xff]
  %v448 = vld [vmem:[%s1 + $0x7e8] sm:$0xff]
  %v449 = vld [vmem:[%s1 + $0x7f0] sm:$0xff]
  %v450 = vld [vmem:[%s1 + $0x7f8] sm:$0xff]
  %v451 = vld [vmem:[%s1 + $0x800] sm:$0xff]
  %v452 = vld [vmem:[%s1 + $0x808] sm:$0xff]
  %v453 = vld [vmem:[%s1 + $0x810] sm:$0xff]
  %v454 = vld [vmem:[%s1 + $0x818] sm:$0xff]
  %v455 = vld [vmem:[%s1 + $0x820] sm:$0xff]
  %v456 = vld [vmem:[%s1 + $0x828] sm:$0xff]
  %v457 = vld [vmem:[%s1 + $0x830] sm:$0xff]
  %v458 = vld [vmem:[%s1 + $0x838] sm:$0xff]
  %v459 = vld [vmem:[%s1 + $0x840] sm:$0xff]
  %v460 = vld [vmem:[%s1 + $0x848] sm:$0xff]
  %v461 = vld [vmem:[%s1 + $0x850] sm:$0xff]
  %v462 = vld [vmem:[%s1 + $0x858] sm:$0xff]
  %v463 = vld [vmem:[%s1 + $0x860] sm:$0xff]
  %v464 = vld [vmem:[%s1 + $0x868] sm:$0xff]
  %v465 = vld [vmem:[%s1 + $0x870] sm:$0xff]
  %v466 = vld [vmem:[%s1 + $0x878] sm:$0xff]
  %v467 = vld [vmem:[%s1 + $0x880] sm:$0xff]
  %v468 = vld [vmem:[%s1 + $0x888] sm:$0xff]
  %v469 = vld [vmem:[%s1 + $0x890] sm:$0xff]
  %v470 = vld [vmem:[%s1 + $0x898] sm:$0xff]
  %v471 = vld [vmem:[%s1 + $0x8a0] sm:$0xff]
  %v472 = vld [vmem:[%s1 + $0x8a8] sm:$0xff]
  %v473 = vld [vmem:[%s1 + $0x8b0] sm:$0xff]
  %v474 = vld [vmem:[%s1 + $0x8b8] sm:$0xff]
  %v475 = vld [vmem:[%s1 + $0x8c0] sm:$0xff]
  %v476 = vld [vmem:[%s1 + $0x8c8] sm:$0xff]
  %v477 = vld [vmem:[%s1 + $0x8d0] sm:$0xff]
  %v478 = vld [vmem:[%s1 + $0x8d8] sm:$0xff]
  %v479 = vld [vmem:[%s1 + $0x8e0] sm:$0xff]
  %v480 = vld [vmem:[%s1 + $0x8e8] sm:$0xff]
  %v481 = vld [vmem:[%s1 + $0x8f0] sm:$0xff]
  %v482 = vld [vmem:[%s1 + $0x8f8] sm:$0xff]
  %v483 = vld [vmem:[%s1 + $0x900] sm:$0xff]
  %v484 = vld [vmem:[%s1 + $0x908] sm:$0xff]
  %v485 = vld [vmem:[%s1 + $0x910] sm:$0xff]
  %v486 = vld [vmem:[%s1 + $0x918] sm:$0xff]
  %v487 = vld [vmem:[%s1 + $0x920] sm:$0xff]
  %v488 = vld [vmem:[%s1 + $0x928] sm:$0xff]
  %v489 = vld [vmem:[%s1 + $0x930] sm:$0xff]
  %v490 = vld [vmem:[%s1 + $0x938] sm:$0xff]
  %v491 = vld [vmem:[%s1 + $0x940] sm:$0xff]
  %v492 = vld [vmem:[%s1 + $0x948] sm:$0xff]
  %v493 = vld [vmem:[%s1 + $0x950] sm:$0xff]
  %v494 = vld [vmem:[%s1 + $0x958] sm:$0xff]
  %v495 = vld [vmem:[%s1 + $0x960] sm:$0xff]
  %v496 = vld [vmem:[%s1 + $0x968] sm:$0xff]
  %v497 = vld [vmem:[%s1 + $0x970] sm:$0xff]
  %v498 = vld [vmem:[%s1 + $0x978] sm:$0xff]
  %v499 = vld [vmem:[%s1 + $0x980] sm:$0xff]
  %v500 = vld [vmem:[%s1 + $0x988] sm:$0xff]
  %v501 = vld [vmem:[%s1 + $0x990] sm:$0xff]
  %v502 = vld [vmem:[%s1 + $0x998] sm:$0xff]
  %v503 = vld [vmem:[%s1 + $0x9a0] sm:$0xff]
  %v504 = vld [vmem:[%s1 + $0x9a8] sm:$0xff]
  %v505 = vld [vmem:[%s1 + $0x9b0] sm:$0xff]
  %v506 = vld [vmem:[%s1 + $0x9b8] sm:$0xff]
  %v507 = vld [vmem:[%s1 + $0x9c0] sm:$0xff]
  %v508 = vld [vmem:[%s1 + $0x9c8] sm:$0xff]
  %v509 = vld [vmem:[%s1 + $0x9d0] sm:$0xff]
  %v510 = vld [vmem:[%s1 + $0x9d8] sm:$0xff]
  %v511 = vld [vmem:[%s1 + $0x9e0] sm:$0xff]
  %v512 = vld [vmem:[%s1 + $0x9e8] sm:$0xff]
  %v513 = vld [vmem:[%s1 + $0x9f0] sm:$0xff]
  %v514 = vld [vmem:[%s1 + $0x9f8] sm:$0xff]
  %v515 = vld [vmem:[%s1 + $0xa00] sm:$0xff]
  %v516 = vld [vmem:[%s1 + $0xa08] sm:$0xff]
  %v517 = vld [vmem:[%s1 + $0xa10] sm:$0xff]
  %v518 = vld [vmem:[%s1 + $0xa18] sm:$0xff]
  %v519 = vld [vmem:[%s1 + $0xa20] sm:$0xff]
  %v520 = vld [vmem:[%s1 + $0xa28] sm:$0xff]
  %v521 = vld [vmem:[%s1 + $0xa30] sm:$0xff]
  %v522 = vld [vmem:[%s1 + $0xa38] sm:$0xff]
  %v523 = vld [vmem:[%s1 + $0xa40] sm:$0xff]
  %v524 = vld [vmem:[%s1 + $0xa48] sm:$0xff]
  %v525 = vld [vmem:[%s1 + $0xa50] sm:$0xff]
  %v526 = vld [vmem:[%s1 + $0xa58] sm:$0xff]
  %v527 = vld [vmem:[%s1 + $0xa60] sm:$0xff]
  %v528 = vld [vmem:[%s1 + $0xa68] sm:$0xff]
  %v529 = vld [vmem:[%s1 + $0xa70] sm:$0xff]
  %v530 = vld [vmem:[%s1 + $0xa78] sm:$0xff]
  %v531 = vld [vmem:[%s1 + $0xa80] sm:$0xff]
  %v532 = vld [vmem:[%s1 + $0xa88] sm:$0xff]
  %v533 = vld [vmem:[%s1 + $0xa90] sm:$0xff]
  %v534 = vld [vmem:[%s1 + $0xa98] sm:$0xff]
  %v535 = vld [vmem:[%s1 + $0xaa0] sm:$0xff]
  %v536 = vld [vmem:[%s1 + $0xaa8] sm:$0xff]
  %v537 = vld [vmem:[%s1 + $0xab0] sm:$0xff]
  %v538 = vld [vmem:[%s1 + $0xab8] sm:$0xff]
  %v539 = vld [vmem:[%s1 + $0xac0] sm:$0xff]
  %v540 = vld [vmem:[%s1 + $0xac8] sm:$0xff]
  %v541 = vld [vmem:[%s1 + $0xad0] sm:$0xff]
  %v542 = vld [vmem:[%s1 + $0xad8] sm:$0xff]
  %v543 = vld [vmem:[%s1 + $0xae0] sm:$0xff]
  %v544 = vld [vmem:[%s1 + $0xae8] sm:$0xff]
  %v545 = vld [vmem:[%s1 + $0xaf0] sm:$0xff]
  %v546 = vld [vmem:[%s1 + $0xaf8] sm:$0xff]
  %v547 = vld [vmem:[%s1 + $0xb00] sm:$0xff]
  %v548 = vld [vmem:[%s1 + $0xb08] sm:$0xff]
  %v549 = vld [vmem:[%s1 + $0xb10] sm:$0xff]
  %v550 = vld [vmem:[%s1 + $0xb18] sm:$0xff]
  %v551 = vld [vmem:[%s1 + $0xb20] sm:$0xff]
  %v552 = vld [vmem:[%s1 + $0xb28] sm:$0xff]
  %v553 = vld [vmem:[%s1 + $0xb30] sm:$0xff]
  %v554 = vld [vmem:[%s1 + $0xb38] sm:$0xff]
  %v555 = vld [vmem:[%s1 + $0xb40] sm:$0xff]
  %v556 = vld [vmem:[%s1 + $0xb48] sm:$0xff]
  %v557 = vld [vmem:[%s1 + $0xb50] sm:$0xff]
  %v558 = vld [vmem:[%s1 + $0xb58] sm:$0xff]
  %v559 = vld [vmem:[%s1 + $0xb60] sm:$0xff]
  %v560 = vld [vmem:[%s1 + $0xb68] sm:$0xff]
  %v561 = vld [vmem:[%s1 + $0xb70] sm:$0xff]
  %v562 = vld [vmem:[%s1 + $0xb78] sm:$0xff]
  %v563 = vld [vmem:[%s1 + $0xb80] sm:$0xff]
  %v564 = vld [vmem:[%s1 + $0xb88] sm:$0xff]
  %v565 = vld [vmem:[%s1 + $0xb90] sm:$0xff]
  %v566 = vld [vmem:[%s1 + $0xb98] sm:$0xff]
  %v567 = vld [vmem:[%s1 + $0xba0] sm:$0xff]
  %v568 = vld [vmem:[%s1 + $0xba8] sm:$0xff]
  %v569 = vld [vmem:[%s1 + $0xbb0] sm:$0xff]
  %v570 = vld [vmem:[%s1 + $0xbb8] sm:$0xff]
  %v571 = vld [vmem:[%s1 + $0xbc0] sm:$0xff]
  %v572 = vld [vmem:[%s1 + $0xbc8] sm:$0xff]
  %v573 = vld [vmem:[%s1 + $0xbd0] sm:$0xff]
  %v574 = vld [vmem:[%s1 + $0xbd8] sm:$0xff]
  %v575 = vld [vmem:[%s1 + $0xbe0] sm:$0xff]
  %v576 = vld [vmem:[%s1 + $0xbe8] sm:$0xff]
  %v577 = vld [vmem:[%s1 + $0xbf0] sm:$0xff]
  %v578 = vld [vmem:[%s1 + $0xbf8] sm:$0xff]
  %v579 = vld [vmem:[%s1 + $0xc00] sm:$0xff]
  %v580 = vld [vmem:[%s1 + $0xc08] sm:$0xff]
  %v581 = vld [vmem:[%s1 + $0xc10] sm:$0xff]
  %v582 = vld [vmem:[%s1 + $0xc18] sm:$0xff]
  %v583 = vld [vmem:[%s1 + $0xc20] sm:$0xff]
  %v584 = vld [vmem:[%s1 + $0xc28] sm:$0xff]
  %v585 = vld [vmem:[%s1 + $0xc30] sm:$0xff]
  %v586 = vld [vmem:[%s1 + $0xc38] sm:$0xff]
  %v587 = vld [vmem:[%s1 + $0xc40] sm:$0xff]
  %v588 = vld [vmem:[%s1 + $0xc48] sm:$0xff]
  %v589 = vld [vmem:[%s1 + $0xc50] sm:$0xff]
  %v590 = vld [vmem:[%s1 + $0xc58] sm:$0xff]
  %v591 = vld [vmem:[%s1 + $0xc60] sm:$0xff]
  %v592 = vld [vmem:[%s1 + $0xc68] sm:$0xff]
  %v593 = vld [vmem:[%s1 + $0xc70] sm:$0xff]
  %v594 = vld [vmem:[%s1 + $0xc78] sm:$0xff]
  %v595 = vld [vmem:[%s2] sm:$0x3]
  %v597 = vperm.slane %v595, 0
  %v598 = vperm.slane %v595, 1
  %v770 = vunpack.c.l.b16 %v26
  %v771 = vunpack.c.h.b16 %v26
  %v772 = vunpack.c.l.b16 %v27
  %v773 = vunpack.c.h.b16 %v27
  %v774 = vunpack.c.l.b16 %v28
  %v775 = vunpack.c.h.b16 %v28
  %v776 = vunpack.c.l.b16 %v29
  %v777 = vunpack.c.h.b16 %v29
  %v778 = vunpack.c.l.b16 %v30
  %v779 = vunpack.c.h.b16 %v30
  %v780 = vunpack.c.l.b16 %v31
  %v781 = vunpack.c.h.b16 %v31
  %v782 = vunpack.c.l.b16 %v32
  %v783 = vunpack.c.h.b16 %v32
  %v784 = vunpack.c.l.b16 %v33
  %v785 = vunpack.c.h.b16 %v33
  %v786 = vunpack.c.l.b16 %v34
  %v787 = vunpack.c.h.b16 %v34
  %v788 = vunpack.c.l.b16 %v35
  %v789 = vunpack.c.h.b16 %v35
  %v790 = vunpack.c.l.b16 %v36
  %v791 = vunpack.c.h.b16 %v36
  %v792 = vunpack.c.l.b16 %v37
  %v793 = vunpack.c.h.b16 %v37
  %v794 = vunpack.c.l.b16 %v38
  %v795 = vunpack.c.l.b16 %v39
  %v796 = vunpack.c.h.b16 %v39
  %v797 = vunpack.c.l.b16 %v40
  %v798 = vunpack.c.h.b16 %v40
  %v799 = vunpack.c.l.b16 %v41
  %v800 = vunpack.c.h.b16 %v41
  %v801 = vunpack.c.l.b16 %v42
  %v802 = vunpack.c.h.b16 %v42
  %v803 = vunpack.c.l.b16 %v43
  %v804 = vunpack.c.h.b16 %v43
  %v805 = vunpack.c.l.b16 %v44
  %v806 = vunpack.c.h.b16 %v44
  %v807 = vunpack.c.l.b16 %v45
  %v808 = vunpack.c.h.b16 %v45
  %v809 = vunpack.c.l.b16 %v46
  %v810 = vunpack.c.h.b16 %v46
  %v811 = vunpack.c.l.b16 %v47
  %v812 = vunpack.c.h.b16 %v47
  %v813 = vunpack.c.l.b16 %v48
  %v814 = vunpack.c.h.b16 %v48
  %v815 = vunpack.c.l.b16 %v49
  %v816 = vunpack.c.h.b16 %v49
  %v817 = vunpack.c.l.b16 %v50
  %v818 = vunpack.c.h.b16 %v50
  %v819 = vunpack.c.l.b16 %v51
  %v820 = vunpack.c.l.b16 %v52
  %v821 = vunpack.c.h.b16 %v52
  %v822 = vunpack.c.l.b16 %v53
  %v823 = vunpack.c.h.b16 %v53
  %v824 = vunpack.c.l.b16 %v54
  %v825 = vunpack.c.h.b16 %v54
  %v826 = vunpack.c.l.b16 %v55
  %v827 = vunpack.c.h.b16 %v55
  %v828 = vunpack.c.l.b16 %v56
  %v829 = vunpack.c.h.b16 %v56
  %v830 = vunpack.c.l.b16 %v57
  %v831 = vunpack.c.h.b16 %v57
  %v832 = vunpack.c.l.b16 %v58
  %v833 = vunpack.c.h.b16 %v58
  %v834 = vunpack.c.l.b16 %v59
  %v835 = vunpack.c.h.b16 %v59
  %v836 = vunpack.c.l.b16 %v60
  %v837 = vunpack.c.h.b16 %v60
  %v838 = vunpack.c.l.b16 %v61
  %v839 = vunpack.c.h.b16 %v61
  %v840 = vunpack.c.l.b16 %v62
  %v841 = vunpack.c.h.b16 %v62
  %v842 = vunpack.c.l.b16 %v63
  %v843 = vunpack.c.h.b16 %v63
  %v844 = vunpack.c.l.b16 %v64
  %v845 = vunpack.c.l.b16 %v65
  %v846 = vunpack.c.h.b16 %v65
  %v847 = vunpack.c.l.b16 %v66
  %v848 = vunpack.c.h.b16 %v66
  %v849 = vunpack.c.l.b16 %v67
  %v850 = vunpack.c.h.b16 %v67
  %v851 = vunpack.c.l.b16 %v68
  %v852 = vunpack.c.h.b16 %v68
  %v853 = vunpack.c.l.b16 %v69
  %v854 = vunpack.c.h.b16 %v69
  %v855 = vunpack.c.l.b16 %v70
  %v856 = vunpack.c.h.b16 %v70
  %v857 = vunpack.c.l.b16 %v71
  %v858 = vunpack.c.h.b16 %v71
  %v859 = vunpack.c.l.b16 %v72
  %v860 = vunpack.c.h.b16 %v72
  %v861 = vunpack.c.l.b16 %v73
  %v862 = vunpack.c.h.b16 %v73
  %v863 = vunpack.c.l.b16 %v74
  %v864 = vunpack.c.h.b16 %v74
  %v865 = vunpack.c.l.b16 %v75
  %v866 = vunpack.c.h.b16 %v75
  %v867 = vunpack.c.l.b16 %v76
  %v868 = vunpack.c.h.b16 %v76
  %v869 = vunpack.c.l.b16 %v77
  %v870 = vunpack.c.l.b16 %v78
  %v871 = vunpack.c.h.b16 %v78
  %v872 = vunpack.c.l.b16 %v79
  %v873 = vunpack.c.h.b16 %v79
  %v874 = vunpack.c.l.b16 %v80
  %v875 = vunpack.c.h.b16 %v80
  %v876 = vunpack.c.l.b16 %v81
  %v877 = vunpack.c.h.b16 %v81
  %v878 = vunpack.c.l.b16 %v82
  %v879 = vunpack.c.h.b16 %v82
  %v880 = vunpack.c.l.b16 %v83
  %v881 = vunpack.c.h.b16 %v83
  %v882 = vunpack.c.l.b16 %v84
  %v883 = vunpack.c.h.b16 %v84
  %v884 = vunpack.c.l.b16 %v85
  %v885 = vunpack.c.h.b16 %v85
  %v886 = vunpack.c.l.b16 %v86
  %v887 = vunpack.c.h.b16 %v86
  %v888 = vunpack.c.l.b16 %v87
  %v889 = vunpack.c.h.b16 %v87
  %v890 = vunpack.c.l.b16 %v88
  %v891 = vunpack.c.h.b16 %v88
  %v892 = vunpack.c.l.b16 %v89
  %v893 = vunpack.c.h.b16 %v89
  %v894 = vunpack.c.l.b16 %v90
  %v895 = vunpack.c.l.b16 %v91
  %v896 = vunpack.c.h.b16 %v91
  %v897 = vunpack.c.l.b16 %v92
  %v898 = vunpack.c.h.b16 %v92
  %v899 = vunpack.c.l.b16 %v93
  %v900 = vunpack.c.h.b16 %v93
  %v901 = vunpack.c.l.b16 %v94
  %v902 = vunpack.c.h.b16 %v94
  %v903 = vunpack.c.l.b16 %v95
  %v904 = vunpack.c.h.b16 %v95
  %v905 = vunpack.c.l.b16 %v96
  %v906 = vunpack.c.h.b16 %v96
  %v907 = vunpack.c.l.b16 %v97
  %v908 = vunpack.c.h.b16 %v97
  %v909 = vunpack.c.l.b16 %v98
  %v910 = vunpack.c.h.b16 %v98
  %v911 = vunpack.c.l.b16 %v99
  %v912 = vunpack.c.h.b16 %v99
  %v913 = vunpack.c.l.b16 %v100
  %v914 = vunpack.c.h.b16 %v100
  %v915 = vunpack.c.l.b16 %v101
  %v916 = vunpack.c.h.b16 %v101
  %v917 = vunpack.c.l.b16 %v102
  %v918 = vunpack.c.h.b16 %v102
  %v919 = vunpack.c.l.b16 %v103
  %v920 = vunpack.c.l.b16 %v104
  %v921 = vunpack.c.h.b16 %v104
  %v922 = vunpack.c.l.b16 %v105
  %v923 = vunpack.c.h.b16 %v105
  %v924 = vunpack.c.l.b16 %v106
  %v925 = vunpack.c.h.b16 %v106
  %v926 = vunpack.c.l.b16 %v107
  %v927 = vunpack.c.h.b16 %v107
  %v928 = vunpack.c.l.b16 %v108
  %v929 = vunpack.c.h.b16 %v108
  %v930 = vunpack.c.l.b16 %v109
  %v931 = vunpack.c.h.b16 %v109
  %v932 = vunpack.c.l.b16 %v110
  %v933 = vunpack.c.h.b16 %v110
  %v934 = vunpack.c.l.b16 %v111
  %v935 = vunpack.c.h.b16 %v111
  %v936 = vunpack.c.l.b16 %v112
  %v937 = vunpack.c.h.b16 %v112
  %v938 = vunpack.c.l.b16 %v113
  %v939 = vunpack.c.h.b16 %v113
  %v940 = vunpack.c.l.b16 %v114
  %v941 = vunpack.c.h.b16 %v114
  %v942 = vunpack.c.l.b16 %v115
  %v943 = vunpack.c.h.b16 %v115
  %v944 = vunpack.c.l.b16 %v116
  %v945 = vunpack.c.l.b16 %v117
  %v946 = vunpack.c.h.b16 %v117
  %v947 = vunpack.c.l.b16 %v118
  %v948 = vunpack.c.h.b16 %v118
  %v949 = vunpack.c.l.b16 %v119
  %v950 = vunpack.c.h.b16 %v119
  %v951 = vunpack.c.l.b16 %v120
  %v952 = vunpack.c.h.b16 %v120
  %v953 = vunpack.c.l.b16 %v121
  %v954 = vunpack.c.h.b16 %v121
  %v955 = vunpack.c.l.b16 %v122
  %v956 = vunpack.c.h.b16 %v122
  %v957 = vunpack.c.l.b16 %v123
  %v958 = vunpack.c.h.b16 %v123
  %v959 = vunpack.c.l.b16 %v124
  %v960 = vunpack.c.h.b16 %v124
  %v961 = vunpack.c.l.b16 %v125
  %v962 = vunpack.c.h.b16 %v125
  %v963 = vunpack.c.l.b16 %v126
  %v964 = vunpack.c.h.b16 %v126
  %v965 = vunpack.c.l.b16 %v127
  %v966 = vunpack.c.h.b16 %v127
  %v967 = vunpack.c.l.b16 %v128
  %v968 = vunpack.c.h.b16 %v128
  %v969 = vunpack.c.l.b16 %v129
  %v970 = vunpack.c.l.b16 %v130
  %v971 = vunpack.c.h.b16 %v130
  %v972 = vunpack.c.l.b16 %v131
  %v973 = vunpack.c.h.b16 %v131
  %v974 = vunpack.c.l.b16 %v132
  %v975 = vunpack.c.h.b16 %v132
  %v976 = vunpack.c.l.b16 %v133
  %v977 = vunpack.c.h.b16 %v133
  %v978 = vunpack.c.l.b16 %v134
  %v979 = vunpack.c.h.b16 %v134
  %v980 = vunpack.c.l.b16 %v135
  %v981 = vunpack.c.h.b16 %v135
  %v982 = vunpack.c.l.b16 %v136
  %v983 = vunpack.c.h.b16 %v136
  %v984 = vunpack.c.l.b16 %v137
  %v985 = vunpack.c.h.b16 %v137
  %v986 = vunpack.c.l.b16 %v138
  %v987 = vunpack.c.h.b16 %v138
  %v988 = vunpack.c.l.b16 %v139
  %v989 = vunpack.c.h.b16 %v139
  %v990 = vunpack.c.l.b16 %v140
  %v991 = vunpack.c.h.b16 %v140
  %v992 = vunpack.c.l.b16 %v141
  %v993 = vunpack.c.h.b16 %v141
  %v994 = vunpack.c.l.b16 %v142
  %v995 = vunpack.c.l.b16 %v143
  %v996 = vunpack.c.h.b16 %v143
  %v997 = vunpack.c.l.b16 %v144
  %v998 = vunpack.c.h.b16 %v144
  %v999 = vunpack.c.l.b16 %v145
  %v1000 = vunpack.c.h.b16 %v145
  %v1001 = vunpack.c.l.b16 %v146
  %v1002 = vunpack.c.h.b16 %v146
  %v1003 = vunpack.c.l.b16 %v147
  %v1004 = vunpack.c.h.b16 %v147
  %v1005 = vunpack.c.l.b16 %v148
  %v1006 = vunpack.c.h.b16 %v148
  %v1007 = vunpack.c.l.b16 %v149
  %v1008 = vunpack.c.h.b16 %v149
  %v1009 = vunpack.c.l.b16 %v150
  %v1010 = vunpack.c.h.b16 %v150
  %v1011 = vunpack.c.l.b16 %v151
  %v1012 = vunpack.c.h.b16 %v151
  %v1013 = vunpack.c.l.b16 %v152
  %v1014 = vunpack.c.h.b16 %v152
  %v1015 = vunpack.c.l.b16 %v153
  %v1016 = vunpack.c.h.b16 %v153
  %v1017 = vunpack.c.l.b16 %v154
  %v1018 = vunpack.c.h.b16 %v154
  %v1019 = vunpack.c.l.b16 %v155
  %v1020 = vunpack.c.l.b16 %v156
  %v1021 = vunpack.c.h.b16 %v156
  %v1022 = vunpack.c.l.b16 %v157
  %v1023 = vunpack.c.h.b16 %v157
  %v1024 = vunpack.c.l.b16 %v158
  %v1025 = vunpack.c.h.b16 %v158
  %v1026 = vunpack.c.l.b16 %v159
  %v1027 = vunpack.c.h.b16 %v159
  %v1028 = vunpack.c.l.b16 %v160
  %v1029 = vunpack.c.h.b16 %v160
  %v1030 = vunpack.c.l.b16 %v161
  %v1031 = vunpack.c.h.b16 %v161
  %v1032 = vunpack.c.l.b16 %v162
  %v1033 = vunpack.c.h.b16 %v162
  %v1034 = vunpack.c.l.b16 %v163
  %v1035 = vunpack.c.h.b16 %v163
  %v1036 = vunpack.c.l.b16 %v164
  %v1037 = vunpack.c.h.b16 %v164
  %v1038 = vunpack.c.l.b16 %v165
  %v1039 = vunpack.c.h.b16 %v165
  %v1040 = vunpack.c.l.b16 %v166
  %v1041 = vunpack.c.h.b16 %v166
  %v1042 = vunpack.c.l.b16 %v167
  %v1043 = vunpack.c.h.b16 %v167
  %v1044 = vunpack.c.l.b16 %v168
  %v1045 = vunpack.c.l.b16 %v169
  %v1046 = vunpack.c.h.b16 %v169
  %v1047 = vunpack.c.l.b16 %v170
  %v1048 = vunpack.c.h.b16 %v170
  %v1049 = vunpack.c.l.b16 %v171
  %v1050 = vunpack.c.h.b16 %v171
  %v1051 = vunpack.c.l.b16 %v172
  %v1052 = vunpack.c.h.b16 %v172
  %v1053 = vunpack.c.l.b16 %v173
  %v1054 = vunpack.c.h.b16 %v173
  %v1055 = vunpack.c.l.b16 %v174
  %v1056 = vunpack.c.h.b16 %v174
  %v1057 = vunpack.c.l.b16 %v175
  %v1058 = vunpack.c.h.b16 %v175
  %v1059 = vunpack.c.l.b16 %v176
  %v1060 = vunpack.c.h.b16 %v176
  %v1061 = vunpack.c.l.b16 %v177
  %v1062 = vunpack.c.h.b16 %v177
  %v1063 = vunpack.c.l.b16 %v178
  %v1064 = vunpack.c.h.b16 %v178
  %v1065 = vunpack.c.l.b16 %v179
  %v1066 = vunpack.c.h.b16 %v179
  %v1067 = vunpack.c.l.b16 %v180
  %v1068 = vunpack.c.h.b16 %v180
  %v1069 = vunpack.c.l.b16 %v181
  %v1070 = vunpack.c.l.b16 %v182
  %v1071 = vunpack.c.h.b16 %v182
  %v1072 = vunpack.c.l.b16 %v183
  %v1073 = vunpack.c.h.b16 %v183
  %v1074 = vunpack.c.l.b16 %v184
  %v1075 = vunpack.c.h.b16 %v184
  %v1076 = vunpack.c.l.b16 %v185
  %v1077 = vunpack.c.h.b16 %v185
  %v1078 = vunpack.c.l.b16 %v186
  %v1079 = vunpack.c.h.b16 %v186
  %v1080 = vunpack.c.l.b16 %v187
  %v1081 = vunpack.c.h.b16 %v187
  %v1082 = vunpack.c.l.b16 %v188
  %v1083 = vunpack.c.h.b16 %v188
  %v1084 = vunpack.c.l.b16 %v189
  %v1085 = vunpack.c.h.b16 %v189
  %v1086 = vunpack.c.l.b16 %v190
  %v1087 = vunpack.c.h.b16 %v190
  %v1088 = vunpack.c.l.b16 %v191
  %v1089 = vunpack.c.h.b16 %v191
  %v1090 = vunpack.c.l.b16 %v192
  %v1091 = vunpack.c.h.b16 %v192
  %v1092 = vunpack.c.l.b16 %v193
  %v1093 = vunpack.c.h.b16 %v193
  %v1094 = vunpack.c.l.b16 %v194
  %v1095 = vpack.c.b16 %v795, %v770
  %v1096 = vpack.c.b16 %v796, %v771
  %v1097 = vpack.c.b16 %v797, %v772
  %v1098 = vpack.c.b16 %v798, %v773
  %v1099 = vpack.c.b16 %v799, %v774
  %v1100 = vpack.c.b16 %v800, %v775
  %v1101 = vpack.c.b16 %v801, %v776
  %v1102 = vpack.c.b16 %v802, %v777
  %v1103 = vpack.c.b16 %v803, %v778
  %v1104 = vpack.c.b16 %v804, %v779
  %v1105 = vpack.c.b16 %v805, %v780
  %v1106 = vpack.c.b16 %v806, %v781
  %v1107 = vpack.c.b16 %v807, %v782
  %v1108 = vpack.c.b16 %v808, %v783
  %v1109 = vpack.c.b16 %v809, %v784
  %v1110 = vpack.c.b16 %v810, %v785
  %v1111 = vpack.c.b16 %v811, %v786
  %v1112 = vpack.c.b16 %v812, %v787
  %v1113 = vpack.c.b16 %v813, %v788
  %v1114 = vpack.c.b16 %v814, %v789
  %v1115 = vpack.c.b16 %v815, %v790
  %v1116 = vpack.c.b16 %v816, %v791
  %v1117 = vpack.c.b16 %v817, %v792
  %v1118 = vpack.c.b16 %v818, %v793
  %v1119 = vpack.c.b16 %v819, %v794
  %v1120 = vpack.c.b16 %v845, %v820
  %v1121 = vpack.c.b16 %v846, %v821
  %v1122 = vpack.c.b16 %v847, %v822
  %v1123 = vpack.c.b16 %v848, %v823
  %v1124 = vpack.c.b16 %v849, %v824
  %v1125 = vpack.c.b16 %v850, %v825
  %v1126 = vpack.c.b16 %v851, %v826
  %v1127 = vpack.c.b16 %v852, %v827
  %v1128 = vpack.c.b16 %v853, %v828
  %v1129 = vpack.c.b16 %v854, %v829
  %v1130 = vpack.c.b16 %v855, %v830
  %v1131 = vpack.c.b16 %v856, %v831
  %v1132 = vpack.c.b16 %v857, %v832
  %v1133 = vpack.c.b16 %v858, %v833
  %v1134 = vpack.c.b16 %v859, %v834
  %v1135 = vpack.c.b16 %v860, %v835
  %v1136 = vpack.c.b16 %v861, %v836
  %v1137 = vpack.c.b16 %v862, %v837
  %v1138 = vpack.c.b16 %v863, %v838
  %v1139 = vpack.c.b16 %v864, %v839
  %v1140 = vpack.c.b16 %v865, %v840
  %v1141 = vpack.c.b16 %v866, %v841
  %v1142 = vpack.c.b16 %v867, %v842
  %v1143 = vpack.c.b16 %v868, %v843
  %v1144 = vpack.c.b16 %v869, %v844
  %v1145 = vpack.c.b16 %v895, %v870
  %v1146 = vpack.c.b16 %v896, %v871
  %v1147 = vpack.c.b16 %v897, %v872
  %v1148 = vpack.c.b16 %v898, %v873
  %v1149 = vpack.c.b16 %v899, %v874
  %v1150 = vpack.c.b16 %v900, %v875
  %v1151 = vpack.c.b16 %v901, %v876
  %v1152 = vpack.c.b16 %v902, %v877
  %v1153 = vpack.c.b16 %v903, %v878
  %v1154 = vpack.c.b16 %v904, %v879
  %v1155 = vpack.c.b16 %v905, %v880
  %v1156 = vpack.c.b16 %v906, %v881
  %v1157 = vpack.c.b16 %v907, %v882
  %v1158 = vpack.c.b16 %v908, %v883
  %v1159 = vpack.c.b16 %v909, %v884
  %v1160 = vpack.c.b16 %v910, %v885
  %v1161 = vpack.c.b16 %v911, %v886
  %v1162 = vpack.c.b16 %v912, %v887
  %v1163 = vpack.c.b16 %v913, %v888
  %v1164 = vpack.c.b16 %v914, %v889
  %v1165 = vpack.c.b16 %v915, %v890
  %v1166 = vpack.c.b16 %v916, %v891
  %v1167 = vpack.c.b16 %v917, %v892
  %v1168 = vpack.c.b16 %v918, %v893
  %v1169 = vpack.c.b16 %v919, %v894
  %v1170 = vpack.c.b16 %v945, %v920
  %v1171 = vpack.c.b16 %v946, %v921
  %v1172 = vpack.c.b16 %v947, %v922
  %v1173 = vpack.c.b16 %v948, %v923
  %v1174 = vpack.c.b16 %v949, %v924
  %v1175 = vpack.c.b16 %v950, %v925
  %v1176 = vpack.c.b16 %v951, %v926
  %v1177 = vpack.c.b16 %v952, %v927
  %v1178 = vpack.c.b16 %v953, %v928
  %v1179 = vpack.c.b16 %v954, %v929
  %v1180 = vpack.c.b16 %v955, %v930
  %v1181 = vpack.c.b16 %v956, %v931
  %v1182 = vpack.c.b16 %v957, %v932
  %v1183 = vpack.c.b16 %v958, %v933
  %v1184 = vpack.c.b16 %v959, %v934
  %v1185 = vpack.c.b16 %v960, %v935
  %v1186 = vpack.c.b16 %v961, %v936
  %v1187 = vpack.c.b16 %v962, %v937
  %v1188 = vpack.c.b16 %v963, %v938
  %v1189 = vpack.c.b16 %v964, %v939
  %v1190 = vpack.c.b16 %v965, %v940
  %v1191 = vpack.c.b16 %v966, %v941
  %v1192 = vpack.c.b16 %v967, %v942
  %v1193 = vpack.c.b16 %v968, %v943
  %v1194 = vpack.c.b16 %v969, %v944
  %v1195 = vpack.c.b16 %v995, %v970
  %v1196 = vpack.c.b16 %v996, %v971
  %v1197 = vpack.c.b16 %v997, %v972
  %v1198 = vpack.c.b16 %v998, %v973
  %v1199 = vpack.c.b16 %v999, %v974
  %v1200 = vpack.c.b16 %v1000, %v975
  %v1201 = vpack.c.b16 %v1001, %v976
  %v1202 = vpack.c.b16 %v1002, %v977
  %v1203 = vpack.c.b16 %v1003, %v978
  %v1204 = vpack.c.b16 %v1004, %v979
  %v1205 = vpack.c.b16 %v1005, %v980
  %v1206 = vpack.c.b16 %v1006, %v981
  %v1207 = vpack.c.b16 %v1007, %v982
  %v1208 = vpack.c.b16 %v1008, %v983
  %v1209 = vpack.c.b16 %v1009, %v984
  %v1210 = vpack.c.b16 %v1010, %v985
  %v1211 = vpack.c.b16 %v1011, %v986
  %v1212 = vpack.c.b16 %v1012, %v987
  %v1213 = vpack.c.b16 %v1013, %v988
  %v1214 = vpack.c.b16 %v1014, %v989
  %v1215 = vpack.c.b16 %v1015, %v990
  %v1216 = vpack.c.b16 %v1016, %v991
  %v1217 = vpack.c.b16 %v1017, %v992
  %v1218 = vpack.c.b16 %v1018, %v993
  %v1219 = vpack.c.b16 %v1019, %v994
  %v1220 = vpack.c.b16 %v1045, %v1020
  %v1221 = vpack.c.b16 %v1046, %v1021
  %v1222 = vpack.c.b16 %v1047, %v1022
  %v1223 = vpack.c.b16 %v1048, %v1023
  %v1224 = vpack.c.b16 %v1049, %v1024
  %v1225 = vpack.c.b16 %v1050, %v1025
  %v1226 = vpack.c.b16 %v1051, %v1026
  %v1227 = vpack.c.b16 %v1052, %v1027
  %v1228 = vpack.c.b16 %v1053, %v1028
  %v1229 = vpack.c.b16 %v1054, %v1029
  %v1230 = vpack.c.b16 %v1055, %v1030
  %v1231 = vpack.c.b16 %v1056, %v1031
  %v1232 = vpack.c.b16 %v1057, %v1032
  %v1233 = vpack.c.b16 %v1058, %v1033
  %v1234 = vpack.c.b16 %v1059, %v1034
  %v1235 = vpack.c.b16 %v1060, %v1035
  %v1236 = vpack.c.b16 %v1061, %v1036
  %v1237 = vpack.c.b16 %v1062, %v1037
  %v1238 = vpack.c.b16 %v1063, %v1038
  %v1239 = vpack.c.b16 %v1064, %v1039
  %v1240 = vpack.c.b16 %v1065, %v1040
  %v1241 = vpack.c.b16 %v1066, %v1041
  %v1242 = vpack.c.b16 %v1067, %v1042
  %v1243 = vpack.c.b16 %v1068, %v1043
  %v1244 = vpack.c.b16 %v1069, %v1044
  %v1245 = vpack.c.b16 %v1070, %v1070
  %v1246 = vpack.c.b16 %v1071, %v1071
  %v1247 = vpack.c.b16 %v1072, %v1072
  %v1248 = vpack.c.b16 %v1073, %v1073
  %v1249 = vpack.c.b16 %v1074, %v1074
  %v1250 = vpack.c.b16 %v1075, %v1075
  %v1251 = vpack.c.b16 %v1076, %v1076
  %v1252 = vpack.c.b16 %v1077, %v1077
  %v1253 = vpack.c.b16 %v1078, %v1078
  %v1254 = vpack.c.b16 %v1079, %v1079
  %v1255 = vpack.c.b16 %v1080, %v1080
  %v1256 = vpack.c.b16 %v1081, %v1081
  %v1257 = vpack.c.b16 %v1082, %v1082
  %v1258 = vpack.c.b16 %v1083, %v1083
  %v1259 = vpack.c.b16 %v1084, %v1084
  %v1260 = vpack.c.b16 %v1085, %v1085
  %v1261 = vpack.c.b16 %v1086, %v1086
  %v1262 = vpack.c.b16 %v1087, %v1087
  %v1263 = vpack.c.b16 %v1088, %v1088
  %v1264 = vpack.c.b16 %v1089, %v1089
  %v1265 = vpack.c.b16 %v1090, %v1090
  %v1266 = vpack.c.b16 %v1091, %v1091
  %v1267 = vpack.c.b16 %v1092, %v1092
  %v1268 = vpack.c.b16 %v1093, %v1093
  %v1269 = vpack.c.b16 %v1094, %v1094
  %v1845 = vunpack.c.l.b16 %v195
  %v1846 = vunpack.c.h.b16 %v195
  %v1847 = vunpack.c.l.b16 %v196
  %v1848 = vunpack.c.h.b16 %v196
  %v1849 = vunpack.c.l.b16 %v197
  %v1850 = vunpack.c.h.b16 %v197
  %v1851 = vunpack.c.l.b16 %v198
  %v1852 = vunpack.c.h.b16 %v198
  %v1853 = vunpack.c.l.b16 %v199
  %v1854 = vunpack.c.h.b16 %v199
  %v1855 = vunpack.c.l.b16 %v200
  %v1856 = vunpack.c.h.b16 %v200
  %v1857 = vunpack.c.l.b16 %v201
  %v1858 = vunpack.c.h.b16 %v201
  %v1859 = vunpack.c.l.b16 %v202
  %v1860 = vunpack.c.h.b16 %v202
  %v1861 = vunpack.c.l.b16 %v203
  %v1862 = vunpack.c.h.b16 %v203
  %v1863 = vunpack.c.l.b16 %v204
  %v1864 = vunpack.c.h.b16 %v204
  %v1865 = vunpack.c.l.b16 %v205
  %v1866 = vunpack.c.h.b16 %v205
  %v1867 = vunpack.c.l.b16 %v206
  %v1868 = vunpack.c.h.b16 %v206
  %v1869 = vunpack.c.l.b16 %v207
  %v1870 = vunpack.c.h.b16 %v207
  %v1871 = vunpack.c.l.b16 %v208
  %v1872 = vunpack.c.h.b16 %v208
  %v1873 = vunpack.c.l.b16 %v209
  %v1874 = vunpack.c.h.b16 %v209
  %v1875 = vunpack.c.l.b16 %v210
  %v1876 = vunpack.c.h.b16 %v210
  %v1877 = vunpack.c.l.b16 %v211
  %v1878 = vunpack.c.h.b16 %v211
  %v1879 = vunpack.c.l.b16 %v212
  %v1880 = vunpack.c.h.b16 %v212
  %v1881 = vunpack.c.l.b16 %v213
  %v1882 = vunpack.c.h.b16 %v213
  %v1883 = vunpack.c.l.b16 %v214
  %v1884 = vunpack.c.h.b16 %v214
  %v1885 = vunpack.c.l.b16 %v215
  %v1886 = vunpack.c.h.b16 %v215
  %v1887 = vunpack.c.l.b16 %v216
  %v1888 = vunpack.c.h.b16 %v216
  %v1889 = vunpack.c.l.b16 %v217
  %v1890 = vunpack.c.h.b16 %v217
  %v1891 = vunpack.c.l.b16 %v218
  %v1892 = vunpack.c.h.b16 %v218
  %v1893 = vunpack.c.l.b16 %v219
  %v1894 = vunpack.c.h.b16 %v219
  %v1895 = vunpack.c.l.b16 %v220
  %v1896 = vunpack.c.h.b16 %v220
  %v1897 = vunpack.c.l.b16 %v221
  %v1898 = vunpack.c.h.b16 %v221
  %v1899 = vunpack.c.l.b16 %v222
  %v1900 = vunpack.c.h.b16 %v222
  %v1901 = vunpack.c.l.b16 %v223
  %v1902 = vunpack.c.h.b16 %v223
  %v1903 = vunpack.c.l.b16 %v224
  %v1904 = vunpack.c.h.b16 %v224
  %v1905 = vunpack.c.l.b16 %v225
  %v1906 = vunpack.c.h.b16 %v225
  %v1907 = vunpack.c.l.b16 %v226
  %v1908 = vunpack.c.h.b16 %v226
  %v1909 = vunpack.c.l.b16 %v227
  %v1910 = vunpack.c.h.b16 %v227
  %v1911 = vunpack.c.l.b16 %v228
  %v1912 = vunpack.c.h.b16 %v228
  %v1913 = vunpack.c.l.b16 %v229
  %v1914 = vunpack.c.h.b16 %v229
  %v1915 = vunpack.c.l.b16 %v230
  %v1916 = vunpack.c.h.b16 %v230
  %v1917 = vunpack.c.l.b16 %v231
  %v1918 = vunpack.c.h.b16 %v231
  %v1919 = vunpack.c.l.b16 %v232
  %v1920 = vunpack.c.h.b16 %v232
  %v1921 = vunpack.c.l.b16 %v233
  %v1922 = vunpack.c.h.b16 %v233
  %v1923 = vunpack.c.l.b16 %v234
  %v1924 = vunpack.c.h.b16 %v234
  %v1925 = vunpack.c.l.b16 %v235
  %v1926 = vunpack.c.h.b16 %v235
  %v1927 = vunpack.c.l.b16 %v236
  %v1928 = vunpack.c.h.b16 %v236
  %v1929 = vunpack.c.l.b16 %v237
  %v1930 = vunpack.c.h.b16 %v237
  %v1931 = vunpack.c.l.b16 %v238
  %v1932 = vunpack.c.h.b16 %v238
  %v1933 = vunpack.c.l.b16 %v239
  %v1934 = vunpack.c.h.b16 %v239
  %v1935 = vunpack.c.l.b16 %v240
  %v1936 = vunpack.c.h.b16 %v240
  %v1937 = vunpack.c.l.b16 %v241
  %v1938 = vunpack.c.h.b16 %v241
  %v1939 = vunpack.c.l.b16 %v242
  %v1940 = vunpack.c.h.b16 %v242
  %v1941 = vunpack.c.l.b16 %v243
  %v1942 = vunpack.c.h.b16 %v243
  %v1943 = vunpack.c.l.b16 %v244
  %v1944 = vunpack.c.h.b16 %v244
  %v1945 = vunpack.c.l.b16 %v245
  %v1946 = vunpack.c.h.b16 %v245
  %v1947 = vunpack.c.l.b16 %v246
  %v1948 = vunpack.c.h.b16 %v246
  %v1949 = vunpack.c.l.b16 %v247
  %v1950 = vunpack.c.h.b16 %v247
  %v1951 = vunpack.c.l.b16 %v248
  %v1952 = vunpack.c.h.b16 %v248
  %v1953 = vunpack.c.l.b16 %v249
  %v1954 = vunpack.c.h.b16 %v249
  %v1955 = vunpack.c.l.b16 %v250
  %v1956 = vunpack.c.h.b16 %v250
  %v1957 = vunpack.c.l.b16 %v251
  %v1958 = vunpack.c.h.b16 %v251
  %v1959 = vunpack.c.l.b16 %v252
  %v1960 = vunpack.c.h.b16 %v252
  %v1961 = vunpack.c.l.b16 %v253
  %v1962 = vunpack.c.h.b16 %v253
  %v1963 = vunpack.c.l.b16 %v254
  %v1964 = vunpack.c.h.b16 %v254
  %v1965 = vunpack.c.l.b16 %v255
  %v1966 = vunpack.c.h.b16 %v255
  %v1967 = vunpack.c.l.b16 %v256
  %v1968 = vunpack.c.h.b16 %v256
  %v1969 = vunpack.c.l.b16 %v257
  %v1970 = vunpack.c.h.b16 %v257
  %v1971 = vunpack.c.l.b16 %v258
  %v1972 = vunpack.c.h.b16 %v258
  %v1973 = vunpack.c.l.b16 %v259
  %v1974 = vunpack.c.h.b16 %v259
  %v1975 = vunpack.c.l.b16 %v260
  %v1976 = vunpack.c.h.b16 %v260
  %v1977 = vunpack.c.l.b16 %v261
  %v1978 = vunpack.c.h.b16 %v261
  %v1979 = vunpack.c.l.b16 %v262
  %v1980 = vunpack.c.h.b16 %v262
  %v1981 = vunpack.c.l.b16 %v263
  %v1982 = vunpack.c.h.b16 %v263
  %v1983 = vunpack.c.l.b16 %v264
  %v1984 = vunpack.c.h.b16 %v264
  %v1985 = vunpack.c.l.b16 %v265
  %v1986 = vunpack.c.h.b16 %v265
  %v1987 = vunpack.c.l.b16 %v266
  %v1988 = vunpack.c.h.b16 %v266
  %v1989 = vunpack.c.l.b16 %v267
  %v1990 = vunpack.c.h.b16 %v267
  %v1991 = vunpack.c.l.b16 %v268
  %v1992 = vunpack.c.h.b16 %v268
  %v1993 = vunpack.c.l.b16 %v269
  %v1994 = vunpack.c.h.b16 %v269
  %v1995 = vunpack.c.l.b16 %v270
  %v1996 = vunpack.c.h.b16 %v270
  %v1997 = vunpack.c.l.b16 %v271
  %v1998 = vunpack.c.h.b16 %v271
  %v1999 = vunpack.c.l.b16 %v272
  %v2000 = vunpack.c.h.b16 %v272
  %v2001 = vunpack.c.l.b16 %v273
  %v2002 = vunpack.c.h.b16 %v273
  %v2003 = vunpack.c.l.b16 %v274
  %v2004 = vunpack.c.h.b16 %v274
  %v2005 = vunpack.c.l.b16 %v275
  %v2006 = vunpack.c.h.b16 %v275
  %v2007 = vunpack.c.l.b16 %v276
  %v2008 = vunpack.c.h.b16 %v276
  %v2009 = vunpack.c.l.b16 %v277
  %v2010 = vunpack.c.h.b16 %v277
  %v2011 = vunpack.c.l.b16 %v278
  %v2012 = vunpack.c.h.b16 %v278
  %v2013 = vunpack.c.l.b16 %v279
  %v2014 = vunpack.c.h.b16 %v279
  %v2015 = vunpack.c.l.b16 %v280
  %v2016 = vunpack.c.h.b16 %v280
  %v2017 = vunpack.c.l.b16 %v281
  %v2018 = vunpack.c.h.b16 %v281
  %v2019 = vunpack.c.l.b16 %v282
  %v2020 = vunpack.c.h.b16 %v282
  %v2021 = vunpack.c.l.b16 %v283
  %v2022 = vunpack.c.h.b16 %v283
  %v2023 = vunpack.c.l.b16 %v284
  %v2024 = vunpack.c.h.b16 %v284
  %v2025 = vunpack.c.l.b16 %v285
  %v2026 = vunpack.c.h.b16 %v285
  %v2027 = vunpack.c.l.b16 %v286
  %v2028 = vunpack.c.h.b16 %v286
  %v2029 = vunpack.c.l.b16 %v287
  %v2030 = vunpack.c.h.b16 %v287
  %v2031 = vunpack.c.l.b16 %v288
  %v2032 = vunpack.c.h.b16 %v288
  %v2033 = vunpack.c.l.b16 %v289
  %v2034 = vunpack.c.h.b16 %v289
  %v2035 = vunpack.c.l.b16 %v290
  %v2036 = vunpack.c.h.b16 %v290
  %v2037 = vunpack.c.l.b16 %v291
  %v2038 = vunpack.c.h.b16 %v291
  %v2039 = vunpack.c.l.b16 %v292
  %v2040 = vunpack.c.h.b16 %v292
  %v2041 = vunpack.c.l.b16 %v293
  %v2042 = vunpack.c.h.b16 %v293
  %v2043 = vunpack.c.l.b16 %v294
  %v2044 = vunpack.c.h.b16 %v294
  %v2045 = vunpack.c.l.b16 %v295
  %v2046 = vunpack.c.h.b16 %v295
  %v2047 = vunpack.c.l.b16 %v296
  %v2048 = vunpack.c.h.b16 %v296
  %v2049 = vunpack.c.l.b16 %v297
  %v2050 = vunpack.c.h.b16 %v297
  %v2051 = vunpack.c.l.b16 %v298
  %v2052 = vunpack.c.h.b16 %v298
  %v2053 = vunpack.c.l.b16 %v299
  %v2054 = vunpack.c.h.b16 %v299
  %v2055 = vunpack.c.l.b16 %v300
  %v2056 = vunpack.c.h.b16 %v300
  %v2057 = vunpack.c.l.b16 %v301
  %v2058 = vunpack.c.h.b16 %v301
  %v2059 = vunpack.c.l.b16 %v302
  %v2060 = vunpack.c.h.b16 %v302
  %v2061 = vunpack.c.l.b16 %v303
  %v2062 = vunpack.c.h.b16 %v303
  %v2063 = vunpack.c.l.b16 %v304
  %v2064 = vunpack.c.h.b16 %v304
  %v2065 = vunpack.c.l.b16 %v305
  %v2066 = vunpack.c.h.b16 %v305
  %v2067 = vunpack.c.l.b16 %v306
  %v2068 = vunpack.c.h.b16 %v306
  %v2069 = vunpack.c.l.b16 %v307
  %v2070 = vunpack.c.h.b16 %v307
  %v2071 = vunpack.c.l.b16 %v308
  %v2072 = vunpack.c.h.b16 %v308
  %v2073 = vunpack.c.l.b16 %v309
  %v2074 = vunpack.c.h.b16 %v309
  %v2075 = vunpack.c.l.b16 %v310
  %v2076 = vunpack.c.h.b16 %v310
  %v2077 = vunpack.c.l.b16 %v311
  %v2078 = vunpack.c.h.b16 %v311
  %v2079 = vunpack.c.l.b16 %v312
  %v2080 = vunpack.c.h.b16 %v312
  %v2081 = vunpack.c.l.b16 %v313
  %v2082 = vunpack.c.h.b16 %v313
  %v2083 = vunpack.c.l.b16 %v314
  %v2084 = vunpack.c.h.b16 %v314
  %v2085 = vunpack.c.l.b16 %v315
  %v2086 = vunpack.c.h.b16 %v315
  %v2087 = vunpack.c.l.b16 %v316
  %v2088 = vunpack.c.h.b16 %v316
  %v2089 = vunpack.c.l.b16 %v317
  %v2090 = vunpack.c.h.b16 %v317
  %v2091 = vunpack.c.l.b16 %v318
  %v2092 = vunpack.c.h.b16 %v318
  %v2093 = vunpack.c.l.b16 %v319
  %v2094 = vunpack.c.h.b16 %v319
  %v2095 = vunpack.c.l.b16 %v320
  %v2096 = vunpack.c.h.b16 %v320
  %v2097 = vunpack.c.l.b16 %v321
  %v2098 = vunpack.c.h.b16 %v321
  %v2099 = vunpack.c.l.b16 %v322
  %v2100 = vunpack.c.h.b16 %v322
  %v2101 = vunpack.c.l.b16 %v323
  %v2102 = vunpack.c.h.b16 %v323
  %v2103 = vunpack.c.l.b16 %v324
  %v2104 = vunpack.c.h.b16 %v324
  %v2105 = vunpack.c.l.b16 %v325
  %v2106 = vunpack.c.h.b16 %v325
  %v2107 = vunpack.c.l.b16 %v326
  %v2108 = vunpack.c.h.b16 %v326
  %v2109 = vunpack.c.l.b16 %v327
  %v2110 = vunpack.c.h.b16 %v327
  %v2111 = vunpack.c.l.b16 %v328
  %v2112 = vunpack.c.h.b16 %v328
  %v2113 = vunpack.c.l.b16 %v329
  %v2114 = vunpack.c.h.b16 %v329
  %v2115 = vunpack.c.l.b16 %v330
  %v2116 = vunpack.c.h.b16 %v330
  %v2117 = vunpack.c.l.b16 %v331
  %v2118 = vunpack.c.h.b16 %v331
  %v2119 = vunpack.c.l.b16 %v332
  %v2120 = vunpack.c.h.b16 %v332
  %v2121 = vunpack.c.l.b16 %v333
  %v2122 = vunpack.c.h.b16 %v333
  %v2123 = vunpack.c.l.b16 %v334
  %v2124 = vunpack.c.h.b16 %v334
  %v2125 = vunpack.c.l.b16 %v335
  %v2126 = vunpack.c.h.b16 %v335
  %v2127 = vunpack.c.l.b16 %v336
  %v2128 = vunpack.c.h.b16 %v336
  %v2129 = vunpack.c.l.b16 %v337
  %v2130 = vunpack.c.h.b16 %v337
  %v2131 = vunpack.c.l.b16 %v338
  %v2132 = vunpack.c.h.b16 %v338
  %v2133 = vunpack.c.l.b16 %v339
  %v2134 = vunpack.c.h.b16 %v339
  %v2135 = vunpack.c.l.b16 %v340
  %v2136 = vunpack.c.h.b16 %v340
  %v2137 = vunpack.c.l.b16 %v341
  %v2138 = vunpack.c.h.b16 %v341
  %v2139 = vunpack.c.l.b16 %v342
  %v2140 = vunpack.c.h.b16 %v342
  %v2141 = vunpack.c.l.b16 %v343
  %v2142 = vunpack.c.h.b16 %v343
  %v2143 = vunpack.c.l.b16 %v344
  %v2144 = vunpack.c.h.b16 %v344
  %v2145 = vunpack.c.l.b16 %v345
  %v2146 = vunpack.c.h.b16 %v345
  %v2147 = vunpack.c.l.b16 %v346
  %v2148 = vunpack.c.h.b16 %v346
  %v2149 = vunpack.c.l.b16 %v347
  %v2150 = vunpack.c.h.b16 %v347
  %v2151 = vunpack.c.l.b16 %v348
  %v2152 = vunpack.c.h.b16 %v348
  %v2153 = vunpack.c.l.b16 %v349
  %v2154 = vunpack.c.h.b16 %v349
  %v2155 = vunpack.c.l.b16 %v350
  %v2156 = vunpack.c.h.b16 %v350
  %v2157 = vunpack.c.l.b16 %v351
  %v2158 = vunpack.c.h.b16 %v351
  %v2159 = vunpack.c.l.b16 %v352
  %v2160 = vunpack.c.h.b16 %v352
  %v2161 = vunpack.c.l.b16 %v353
  %v2162 = vunpack.c.h.b16 %v353
  %v2163 = vunpack.c.l.b16 %v354
  %v2164 = vunpack.c.h.b16 %v354
  %v2165 = vunpack.c.l.b16 %v355
  %v2166 = vunpack.c.h.b16 %v355
  %v2167 = vunpack.c.l.b16 %v356
  %v2168 = vunpack.c.h.b16 %v356
  %v2169 = vunpack.c.l.b16 %v357
  %v2170 = vunpack.c.h.b16 %v357
  %v2171 = vunpack.c.l.b16 %v358
  %v2172 = vunpack.c.h.b16 %v358
  %v2173 = vunpack.c.l.b16 %v359
  %v2174 = vunpack.c.h.b16 %v359
  %v2175 = vunpack.c.l.b16 %v360
  %v2176 = vunpack.c.h.b16 %v360
  %v2177 = vunpack.c.l.b16 %v361
  %v2178 = vunpack.c.h.b16 %v361
  %v2179 = vunpack.c.l.b16 %v362
  %v2180 = vunpack.c.h.b16 %v362
  %v2181 = vunpack.c.l.b16 %v363
  %v2182 = vunpack.c.h.b16 %v363
  %v2183 = vunpack.c.l.b16 %v364
  %v2184 = vunpack.c.h.b16 %v364
  %v2185 = vunpack.c.l.b16 %v365
  %v2186 = vunpack.c.h.b16 %v365
  %v2187 = vunpack.c.l.b16 %v366
  %v2188 = vunpack.c.h.b16 %v366
  %v2189 = vunpack.c.l.b16 %v367
  %v2190 = vunpack.c.h.b16 %v367
  %v2191 = vunpack.c.l.b16 %v368
  %v2192 = vunpack.c.h.b16 %v368
  %v2193 = vunpack.c.l.b16 %v369
  %v2194 = vunpack.c.h.b16 %v369
  %v2195 = vunpack.c.l.b16 %v370
  %v2196 = vunpack.c.h.b16 %v370
  %v2197 = vunpack.c.l.b16 %v371
  %v2198 = vunpack.c.h.b16 %v371
  %v2199 = vunpack.c.l.b16 %v372
  %v2200 = vunpack.c.h.b16 %v372
  %v2201 = vunpack.c.l.b16 %v373
  %v2202 = vunpack.c.h.b16 %v373
  %v2203 = vunpack.c.l.b16 %v374
  %v2204 = vunpack.c.h.b16 %v374
  %v2205 = vunpack.c.l.b16 %v375
  %v2206 = vunpack.c.h.b16 %v375
  %v2207 = vunpack.c.l.b16 %v376
  %v2208 = vunpack.c.h.b16 %v376
  %v2209 = vunpack.c.l.b16 %v377
  %v2210 = vunpack.c.h.b16 %v377
  %v2211 = vunpack.c.l.b16 %v378
  %v2212 = vunpack.c.h.b16 %v378
  %v2213 = vunpack.c.l.b16 %v379
  %v2214 = vunpack.c.h.b16 %v379
  %v2215 = vunpack.c.l.b16 %v380
  %v2216 = vunpack.c.h.b16 %v380
  %v2217 = vunpack.c.l.b16 %v381
  %v2218 = vunpack.c.h.b16 %v381
  %v2219 = vunpack.c.l.b16 %v382
  %v2220 = vunpack.c.h.b16 %v382
  %v2221 = vunpack.c.l.b16 %v383
  %v2222 = vunpack.c.h.b16 %v383
  %v2223 = vunpack.c.l.b16 %v384
  %v2224 = vunpack.c.h.b16 %v384
  %v2225 = vunpack.c.l.b16 %v385
  %v2226 = vunpack.c.h.b16 %v385
  %v2227 = vunpack.c.l.b16 %v386
  %v2228 = vunpack.c.h.b16 %v386
  %v2229 = vunpack.c.l.b16 %v387
  %v2230 = vunpack.c.h.b16 %v387
  %v2231 = vunpack.c.l.b16 %v388
  %v2232 = vunpack.c.h.b16 %v388
  %v2233 = vunpack.c.l.b16 %v389
  %v2234 = vunpack.c.h.b16 %v389
  %v2235 = vunpack.c.l.b16 %v390
  %v2236 = vunpack.c.h.b16 %v390
  %v2237 = vunpack.c.l.b16 %v391
  %v2238 = vunpack.c.h.b16 %v391
  %v2239 = vunpack.c.l.b16 %v392
  %v2240 = vunpack.c.h.b16 %v392
  %v2241 = vunpack.c.l.b16 %v393
  %v2242 = vunpack.c.h.b16 %v393
  %v2243 = vunpack.c.l.b16 %v394
  %v2244 = vunpack.c.h.b16 %v394
  %v2245 = vunpack.c.l.b16 %v395
  %v2246 = vunpack.c.h.b16 %v395
  %v2247 = vunpack.c.l.b16 %v396
  %v2248 = vunpack.c.h.b16 %v396
  %v2249 = vunpack.c.l.b16 %v397
  %v2250 = vunpack.c.h.b16 %v397
  %v2251 = vunpack.c.l.b16 %v398
  %v2252 = vunpack.c.h.b16 %v398
  %v2253 = vunpack.c.l.b16 %v399
  %v2254 = vunpack.c.h.b16 %v399
  %v2255 = vunpack.c.l.b16 %v400
  %v2256 = vunpack.c.h.b16 %v400
  %v2257 = vunpack.c.l.b16 %v401
  %v2258 = vunpack.c.h.b16 %v401
  %v2259 = vunpack.c.l.b16 %v402
  %v2260 = vunpack.c.h.b16 %v402
  %v2261 = vunpack.c.l.b16 %v403
  %v2262 = vunpack.c.h.b16 %v403
  %v2263 = vunpack.c.l.b16 %v404
  %v2264 = vunpack.c.h.b16 %v404
  %v2265 = vunpack.c.l.b16 %v405
  %v2266 = vunpack.c.h.b16 %v405
  %v2267 = vunpack.c.l.b16 %v406
  %v2268 = vunpack.c.h.b16 %v406
  %v2269 = vunpack.c.l.b16 %v407
  %v2270 = vunpack.c.h.b16 %v407
  %v2271 = vunpack.c.l.b16 %v408
  %v2272 = vunpack.c.h.b16 %v408
  %v2273 = vunpack.c.l.b16 %v409
  %v2274 = vunpack.c.h.b16 %v409
  %v2275 = vunpack.c.l.b16 %v410
  %v2276 = vunpack.c.h.b16 %v410
  %v2277 = vunpack.c.l.b16 %v411
  %v2278 = vunpack.c.h.b16 %v411
  %v2279 = vunpack.c.l.b16 %v412
  %v2280 = vunpack.c.h.b16 %v412
  %v2281 = vunpack.c.l.b16 %v413
  %v2282 = vunpack.c.h.b16 %v413
  %v2283 = vunpack.c.l.b16 %v414
  %v2284 = vunpack.c.h.b16 %v414
  %v2285 = vunpack.c.l.b16 %v415
  %v2286 = vunpack.c.h.b16 %v415
  %v2287 = vunpack.c.l.b16 %v416
  %v2288 = vunpack.c.h.b16 %v416
  %v2289 = vunpack.c.l.b16 %v417
  %v2290 = vunpack.c.h.b16 %v417
  %v2291 = vunpack.c.l.b16 %v418
  %v2292 = vunpack.c.h.b16 %v418
  %v2293 = vunpack.c.l.b16 %v419
  %v2294 = vunpack.c.h.b16 %v419
  %v2295 = vunpack.c.l.b16 %v420
  %v2296 = vunpack.c.h.b16 %v420
  %v2297 = vunpack.c.l.b16 %v421
  %v2298 = vunpack.c.h.b16 %v421
  %v2299 = vunpack.c.l.b16 %v422
  %v2300 = vunpack.c.h.b16 %v422
  %v2301 = vunpack.c.l.b16 %v423
  %v2302 = vunpack.c.h.b16 %v423
  %v2303 = vunpack.c.l.b16 %v424
  %v2304 = vunpack.c.h.b16 %v424
  %v2305 = vunpack.c.l.b16 %v425
  %v2306 = vunpack.c.h.b16 %v425
  %v2307 = vunpack.c.l.b16 %v426
  %v2308 = vunpack.c.h.b16 %v426
  %v2309 = vunpack.c.l.b16 %v427
  %v2310 = vunpack.c.h.b16 %v427
  %v2311 = vunpack.c.l.b16 %v428
  %v2312 = vunpack.c.h.b16 %v428
  %v2313 = vunpack.c.l.b16 %v429
  %v2314 = vunpack.c.h.b16 %v429
  %v2315 = vunpack.c.l.b16 %v430
  %v2316 = vunpack.c.h.b16 %v430
  %v2317 = vunpack.c.l.b16 %v431
  %v2318 = vunpack.c.h.b16 %v431
  %v2319 = vunpack.c.l.b16 %v432
  %v2320 = vunpack.c.h.b16 %v432
  %v2321 = vunpack.c.l.b16 %v433
  %v2322 = vunpack.c.h.b16 %v433
  %v2323 = vunpack.c.l.b16 %v434
  %v2324 = vunpack.c.h.b16 %v434
  %v2325 = vunpack.c.l.b16 %v435
  %v2326 = vunpack.c.h.b16 %v435
  %v2327 = vunpack.c.l.b16 %v436
  %v2328 = vunpack.c.h.b16 %v436
  %v2329 = vunpack.c.l.b16 %v437
  %v2330 = vunpack.c.h.b16 %v437
  %v2331 = vunpack.c.l.b16 %v438
  %v2332 = vunpack.c.h.b16 %v438
  %v2333 = vunpack.c.l.b16 %v439
  %v2334 = vunpack.c.h.b16 %v439
  %v2335 = vunpack.c.l.b16 %v440
  %v2336 = vunpack.c.h.b16 %v440
  %v2337 = vunpack.c.l.b16 %v441
  %v2338 = vunpack.c.h.b16 %v441
  %v2339 = vunpack.c.l.b16 %v442
  %v2340 = vunpack.c.h.b16 %v442
  %v2341 = vunpack.c.l.b16 %v443
  %v2342 = vunpack.c.h.b16 %v443
  %v2343 = vunpack.c.l.b16 %v444
  %v2344 = vunpack.c.h.b16 %v444
  %v2345 = vunpack.c.l.b16 %v445
  %v2346 = vunpack.c.h.b16 %v445
  %v2347 = vunpack.c.l.b16 %v446
  %v2348 = vunpack.c.h.b16 %v446
  %v2349 = vunpack.c.l.b16 %v447
  %v2350 = vunpack.c.h.b16 %v447
  %v2351 = vunpack.c.l.b16 %v448
  %v2352 = vunpack.c.h.b16 %v448
  %v2353 = vunpack.c.l.b16 %v449
  %v2354 = vunpack.c.h.b16 %v449
  %v2355 = vunpack.c.l.b16 %v450
  %v2356 = vunpack.c.h.b16 %v450
  %v2357 = vunpack.c.l.b16 %v451
  %v2358 = vunpack.c.h.b16 %v451
  %v2359 = vunpack.c.l.b16 %v452
  %v2360 = vunpack.c.h.b16 %v452
  %v2361 = vunpack.c.l.b16 %v453
  %v2362 = vunpack.c.h.b16 %v453
  %v2363 = vunpack.c.l.b16 %v454
  %v2364 = vunpack.c.h.b16 %v454
  %v2365 = vunpack.c.l.b16 %v455
  %v2366 = vunpack.c.h.b16 %v455
  %v2367 = vunpack.c.l.b16 %v456
  %v2368 = vunpack.c.h.b16 %v456
  %v2369 = vunpack.c.l.b16 %v457
  %v2370 = vunpack.c.h.b16 %v457
  %v2371 = vunpack.c.l.b16 %v458
  %v2372 = vunpack.c.h.b16 %v458
  %v2373 = vunpack.c.l.b16 %v459
  %v2374 = vunpack.c.h.b16 %v459
  %v2375 = vunpack.c.l.b16 %v460
  %v2376 = vunpack.c.h.b16 %v460
  %v2377 = vunpack.c.l.b16 %v461
  %v2378 = vunpack.c.h.b16 %v461
  %v2379 = vunpack.c.l.b16 %v462
  %v2380 = vunpack.c.h.b16 %v462
  %v2381 = vunpack.c.l.b16 %v463
  %v2382 = vunpack.c.h.b16 %v463
  %v2383 = vunpack.c.l.b16 %v464
  %v2384 = vunpack.c.h.b16 %v464
  %v2385 = vunpack.c.l.b16 %v465
  %v2386 = vunpack.c.h.b16 %v465
  %v2387 = vunpack.c.l.b16 %v466
  %v2388 = vunpack.c.h.b16 %v466
  %v2389 = vunpack.c.l.b16 %v467
  %v2390 = vunpack.c.h.b16 %v467
  %v2391 = vunpack.c.l.b16 %v468
  %v2392 = vunpack.c.h.b16 %v468
  %v2393 = vunpack.c.l.b16 %v469
  %v2394 = vunpack.c.h.b16 %v469
  %v2395 = vunpack.c.l.b16 %v470
  %v2396 = vunpack.c.h.b16 %v470
  %v2397 = vunpack.c.l.b16 %v471
  %v2398 = vunpack.c.h.b16 %v471
  %v2399 = vunpack.c.l.b16 %v472
  %v2400 = vunpack.c.h.b16 %v472
  %v2401 = vunpack.c.l.b16 %v473
  %v2402 = vunpack.c.h.b16 %v473
  %v2403 = vunpack.c.l.b16 %v474
  %v2404 = vunpack.c.h.b16 %v474
  %v2405 = vunpack.c.l.b16 %v475
  %v2406 = vunpack.c.h.b16 %v475
  %v2407 = vunpack.c.l.b16 %v476
  %v2408 = vunpack.c.h.b16 %v476
  %v2409 = vunpack.c.l.b16 %v477
  %v2410 = vunpack.c.h.b16 %v477
  %v2411 = vunpack.c.l.b16 %v478
  %v2412 = vunpack.c.h.b16 %v478
  %v2413 = vunpack.c.l.b16 %v479
  %v2414 = vunpack.c.h.b16 %v479
  %v2415 = vunpack.c.l.b16 %v480
  %v2416 = vunpack.c.h.b16 %v480
  %v2417 = vunpack.c.l.b16 %v481
  %v2418 = vunpack.c.h.b16 %v481
  %v2419 = vunpack.c.l.b16 %v482
  %v2420 = vunpack.c.h.b16 %v482
  %v2421 = vunpack.c.l.b16 %v483
  %v2422 = vunpack.c.h.b16 %v483
  %v2423 = vunpack.c.l.b16 %v484
  %v2424 = vunpack.c.h.b16 %v484
  %v2425 = vunpack.c.l.b16 %v485
  %v2426 = vunpack.c.h.b16 %v485
  %v2427 = vunpack.c.l.b16 %v486
  %v2428 = vunpack.c.h.b16 %v486
  %v2429 = vunpack.c.l.b16 %v487
  %v2430 = vunpack.c.h.b16 %v487
  %v2431 = vunpack.c.l.b16 %v488
  %v2432 = vunpack.c.h.b16 %v488
  %v2433 = vunpack.c.l.b16 %v489
  %v2434 = vunpack.c.h.b16 %v489
  %v2435 = vunpack.c.l.b16 %v490
  %v2436 = vunpack.c.h.b16 %v490
  %v2437 = vunpack.c.l.b16 %v491
  %v2438 = vunpack.c.h.b16 %v491
  %v2439 = vunpack.c.l.b16 %v492
  %v2440 = vunpack.c.h.b16 %v492
  %v2441 = vunpack.c.l.b16 %v493
  %v2442 = vunpack.c.h.b16 %v493
  %v2443 = vunpack.c.l.b16 %v494
  %v2444 = vunpack.c.h.b16 %v494
  %v2445 = vunpack.c.l.b16 %v495
  %v2446 = vunpack.c.h.b16 %v495
  %v2447 = vunpack.c.l.b16 %v496
  %v2448 = vunpack.c.h.b16 %v496
  %v2449 = vunpack.c.l.b16 %v497
  %v2450 = vunpack.c.h.b16 %v497
  %v2451 = vunpack.c.l.b16 %v498
  %v2452 = vunpack.c.h.b16 %v498
  %v2453 = vunpack.c.l.b16 %v499
  %v2454 = vunpack.c.h.b16 %v499
  %v2455 = vunpack.c.l.b16 %v500
  %v2456 = vunpack.c.h.b16 %v500
  %v2457 = vunpack.c.l.b16 %v501
  %v2458 = vunpack.c.h.b16 %v501
  %v2459 = vunpack.c.l.b16 %v502
  %v2460 = vunpack.c.h.b16 %v502
  %v2461 = vunpack.c.l.b16 %v503
  %v2462 = vunpack.c.h.b16 %v503
  %v2463 = vunpack.c.l.b16 %v504
  %v2464 = vunpack.c.h.b16 %v504
  %v2465 = vunpack.c.l.b16 %v505
  %v2466 = vunpack.c.h.b16 %v505
  %v2467 = vunpack.c.l.b16 %v506
  %v2468 = vunpack.c.h.b16 %v506
  %v2469 = vunpack.c.l.b16 %v507
  %v2470 = vunpack.c.h.b16 %v507
  %v2471 = vunpack.c.l.b16 %v508
  %v2472 = vunpack.c.h.b16 %v508
  %v2473 = vunpack.c.l.b16 %v509
  %v2474 = vunpack.c.h.b16 %v509
  %v2475 = vunpack.c.l.b16 %v510
  %v2476 = vunpack.c.h.b16 %v510
  %v2477 = vunpack.c.l.b16 %v511
  %v2478 = vunpack.c.h.b16 %v511
  %v2479 = vunpack.c.l.b16 %v512
  %v2480 = vunpack.c.h.b16 %v512
  %v2481 = vunpack.c.l.b16 %v513
  %v2482 = vunpack.c.h.b16 %v513
  %v2483 = vunpack.c.l.b16 %v514
  %v2484 = vunpack.c.h.b16 %v514
  %v2485 = vunpack.c.l.b16 %v515
  %v2486 = vunpack.c.h.b16 %v515
  %v2487 = vunpack.c.l.b16 %v516
  %v2488 = vunpack.c.h.b16 %v516
  %v2489 = vunpack.c.l.b16 %v517
  %v2490 = vunpack.c.h.b16 %v517
  %v2491 = vunpack.c.l.b16 %v518
  %v2492 = vunpack.c.h.b16 %v518
  %v2493 = vunpack.c.l.b16 %v519
  %v2494 = vunpack.c.h.b16 %v519
  %v2495 = vunpack.c.l.b16 %v520
  %v2496 = vunpack.c.h.b16 %v520
  %v2497 = vunpack.c.l.b16 %v521
  %v2498 = vunpack.c.h.b16 %v521
  %v2499 = vunpack.c.l.b16 %v522
  %v2500 = vunpack.c.h.b16 %v522
  %v2501 = vunpack.c.l.b16 %v523
  %v2502 = vunpack.c.h.b16 %v523
  %v2503 = vunpack.c.l.b16 %v524
  %v2504 = vunpack.c.h.b16 %v524
  %v2505 = vunpack.c.l.b16 %v525
  %v2506 = vunpack.c.h.b16 %v525
  %v2507 = vunpack.c.l.b16 %v526
  %v2508 = vunpack.c.h.b16 %v526
  %v2509 = vunpack.c.l.b16 %v527
  %v2510 = vunpack.c.h.b16 %v527
  %v2511 = vunpack.c.l.b16 %v528
  %v2512 = vunpack.c.h.b16 %v528
  %v2513 = vunpack.c.l.b16 %v529
  %v2514 = vunpack.c.h.b16 %v529
  %v2515 = vunpack.c.l.b16 %v530
  %v2516 = vunpack.c.h.b16 %v530
  %v2517 = vunpack.c.l.b16 %v531
  %v2518 = vunpack.c.h.b16 %v531
  %v2519 = vunpack.c.l.b16 %v532
  %v2520 = vunpack.c.h.b16 %v532
  %v2521 = vunpack.c.l.b16 %v533
  %v2522 = vunpack.c.h.b16 %v533
  %v2523 = vunpack.c.l.b16 %v534
  %v2524 = vunpack.c.h.b16 %v534
  %v2525 = vunpack.c.l.b16 %v535
  %v2526 = vunpack.c.h.b16 %v535
  %v2527 = vunpack.c.l.b16 %v536
  %v2528 = vunpack.c.h.b16 %v536
  %v2529 = vunpack.c.l.b16 %v537
  %v2530 = vunpack.c.h.b16 %v537
  %v2531 = vunpack.c.l.b16 %v538
  %v2532 = vunpack.c.h.b16 %v538
  %v2533 = vunpack.c.l.b16 %v539
  %v2534 = vunpack.c.h.b16 %v539
  %v2535 = vunpack.c.l.b16 %v540
  %v2536 = vunpack.c.h.b16 %v540
  %v2537 = vunpack.c.l.b16 %v541
  %v2538 = vunpack.c.h.b16 %v541
  %v2539 = vunpack.c.l.b16 %v542
  %v2540 = vunpack.c.h.b16 %v542
  %v2541 = vunpack.c.l.b16 %v543
  %v2542 = vunpack.c.h.b16 %v543
  %v2543 = vunpack.c.l.b16 %v544
  %v2544 = vunpack.c.h.b16 %v544
  %v2545 = vunpack.c.l.b16 %v545
  %v2546 = vunpack.c.h.b16 %v545
  %v2547 = vunpack.c.l.b16 %v546
  %v2548 = vunpack.c.h.b16 %v546
  %v2549 = vunpack.c.l.b16 %v547
  %v2550 = vunpack.c.h.b16 %v547
  %v2551 = vunpack.c.l.b16 %v548
  %v2552 = vunpack.c.h.b16 %v548
  %v2553 = vunpack.c.l.b16 %v549
  %v2554 = vunpack.c.h.b16 %v549
  %v2555 = vunpack.c.l.b16 %v550
  %v2556 = vunpack.c.h.b16 %v550
  %v2557 = vunpack.c.l.b16 %v551
  %v2558 = vunpack.c.h.b16 %v551
  %v2559 = vunpack.c.l.b16 %v552
  %v2560 = vunpack.c.h.b16 %v552
  %v2561 = vunpack.c.l.b16 %v553
  %v2562 = vunpack.c.h.b16 %v553
  %v2563 = vunpack.c.l.b16 %v554
  %v2564 = vunpack.c.h.b16 %v554
  %v2565 = vunpack.c.l.b16 %v555
  %v2566 = vunpack.c.h.b16 %v555
  %v2567 = vunpack.c.l.b16 %v556
  %v2568 = vunpack.c.h.b16 %v556
  %v2569 = vunpack.c.l.b16 %v557
  %v2570 = vunpack.c.h.b16 %v557
  %v2571 = vunpack.c.l.b16 %v558
  %v2572 = vunpack.c.h.b16 %v558
  %v2573 = vunpack.c.l.b16 %v559
  %v2574 = vunpack.c.h.b16 %v559
  %v2575 = vunpack.c.l.b16 %v560
  %v2576 = vunpack.c.h.b16 %v560
  %v2577 = vunpack.c.l.b16 %v561
  %v2578 = vunpack.c.h.b16 %v561
  %v2579 = vunpack.c.l.b16 %v562
  %v2580 = vunpack.c.h.b16 %v562
  %v2581 = vunpack.c.l.b16 %v563
  %v2582 = vunpack.c.h.b16 %v563
  %v2583 = vunpack.c.l.b16 %v564
  %v2584 = vunpack.c.h.b16 %v564
  %v2585 = vunpack.c.l.b16 %v565
  %v2586 = vunpack.c.h.b16 %v565
  %v2587 = vunpack.c.l.b16 %v566
  %v2588 = vunpack.c.h.b16 %v566
  %v2589 = vunpack.c.l.b16 %v567
  %v2590 = vunpack.c.h.b16 %v567
  %v2591 = vunpack.c.l.b16 %v568
  %v2592 = vunpack.c.h.b16 %v568
  %v2593 = vunpack.c.l.b16 %v569
  %v2594 = vunpack.c.h.b16 %v569
  %v2595 = vunpack.c.l.b16 %v570
  %v2596 = vunpack.c.h.b16 %v570
  %v2597 = vunpack.c.l.b16 %v571
  %v2598 = vunpack.c.h.b16 %v571
  %v2599 = vunpack.c.l.b16 %v572
  %v2600 = vunpack.c.h.b16 %v572
  %v2601 = vunpack.c.l.b16 %v573
  %v2602 = vunpack.c.h.b16 %v573
  %v2603 = vunpack.c.l.b16 %v574
  %v2604 = vunpack.c.h.b16 %v574
  %v2605 = vunpack.c.l.b16 %v575
  %v2606 = vunpack.c.h.b16 %v575
  %v2607 = vunpack.c.l.b16 %v576
  %v2608 = vunpack.c.h.b16 %v576
  %v2609 = vunpack.c.l.b16 %v577
  %v2610 = vunpack.c.h.b16 %v577
  %v2611 = vunpack.c.l.b16 %v578
  %v2612 = vunpack.c.h.b16 %v578
  %v2613 = vunpack.c.l.b16 %v579
  %v2614 = vunpack.c.h.b16 %v579
  %v2615 = vunpack.c.l.b16 %v580
  %v2616 = vunpack.c.h.b16 %v580
  %v2617 = vunpack.c.l.b16 %v581
  %v2618 = vunpack.c.h.b16 %v581
  %v2619 = vunpack.c.l.b16 %v582
  %v2620 = vunpack.c.h.b16 %v582
  %v2621 = vunpack.c.l.b16 %v583
  %v2622 = vunpack.c.h.b16 %v583
  %v2623 = vunpack.c.l.b16 %v584
  %v2624 = vunpack.c.h.b16 %v584
  %v2625 = vunpack.c.l.b16 %v585
  %v2626 = vunpack.c.h.b16 %v585
  %v2627 = vunpack.c.l.b16 %v586
  %v2628 = vunpack.c.h.b16 %v586
  %v2629 = vunpack.c.l.b16 %v587
  %v2630 = vunpack.c.h.b16 %v587
  %v2631 = vunpack.c.l.b16 %v588
  %v2632 = vunpack.c.h.b16 %v588
  %v2633 = vunpack.c.l.b16 %v589
  %v2634 = vunpack.c.h.b16 %v589
  %v2635 = vunpack.c.l.b16 %v590
  %v2636 = vunpack.c.h.b16 %v590
  %v2637 = vunpack.c.l.b16 %v591
  %v2638 = vunpack.c.h.b16 %v591
  %v2639 = vunpack.c.l.b16 %v592
  %v2640 = vunpack.c.h.b16 %v592
  %v2641 = vunpack.c.l.b16 %v593
  %v2642 = vunpack.c.h.b16 %v593
  %v2643 = vunpack.c.l.b16 %v594
  %v2644 = vunpack.c.h.b16 %v594
  %v2645 = vpack.c.b16 %v1847, %v1845
  %v2646 = vpack.c.b16 %v1848, %v1846
  %v2647 = vpack.c.b16 %v1851, %v1849
  %v2648 = vpack.c.b16 %v1852, %v1850
  %v2649 = vpack.c.b16 %v1855, %v1853
  %v2650 = vpack.c.b16 %v1856, %v1854
  %v2651 = vpack.c.b16 %v1859, %v1857
  %v2652 = vpack.c.b16 %v1860, %v1858
  %v2653 = vpack.c.b16 %v1863, %v1861
  %v2654 = vpack.c.b16 %v1864, %v1862
  %v2655 = vpack.c.b16 %v1867, %v1865
  %v2656 = vpack.c.b16 %v1868, %v1866
  %v2657 = vpack.c.b16 %v1871, %v1869
  %v2658 = vpack.c.b16 %v1872, %v1870
  %v2659 = vpack.c.b16 %v1875, %v1873
  %v2660 = vpack.c.b16 %v1876, %v1874
  %v2661 = vpack.c.b16 %v1879, %v1877
  %v2662 = vpack.c.b16 %v1880, %v1878
  %v2663 = vpack.c.b16 %v1883, %v1881
  %v2664 = vpack.c.b16 %v1884, %v1882
  %v2665 = vpack.c.b16 %v1887, %v1885
  %v2666 = vpack.c.b16 %v1888, %v1886
  %v2667 = vpack.c.b16 %v1891, %v1889
  %v2668 = vpack.c.b16 %v1892, %v1890
  %v2669 = vpack.c.b16 %v1895, %v1893
  %v2670 = vpack.c.b16 %v1896, %v1894
  %v2671 = vpack.c.b16 %v1899, %v1897
  %v2672 = vpack.c.b16 %v1900, %v1898
  %v2673 = vpack.c.b16 %v1903, %v1901
  %v2674 = vpack.c.b16 %v1904, %v1902
  %v2675 = vpack.c.b16 %v1907, %v1905
  %v2676 = vpack.c.b16 %v1908, %v1906
  %v2677 = vpack.c.b16 %v1911, %v1909
  %v2678 = vpack.c.b16 %v1912, %v1910
  %v2679 = vpack.c.b16 %v1915, %v1913
  %v2680 = vpack.c.b16 %v1916, %v1914
  %v2681 = vpack.c.b16 %v1919, %v1917
  %v2682 = vpack.c.b16 %v1920, %v1918
  %v2683 = vpack.c.b16 %v1923, %v1921
  %v2684 = vpack.c.b16 %v1924, %v1922
  %v2685 = vpack.c.b16 %v1927, %v1925
  %v2686 = vpack.c.b16 %v1928, %v1926
  %v2687 = vpack.c.b16 %v1931, %v1929
  %v2688 = vpack.c.b16 %v1932, %v1930
  %v2689 = vpack.c.b16 %v1935, %v1933
  %v2690 = vpack.c.b16 %v1936, %v1934
  %v2691 = vpack.c.b16 %v1939, %v1937
  %v2692 = vpack.c.b16 %v1940, %v1938
  %v2693 = vpack.c.b16 %v1943, %v1941
  %v2694 = vpack.c.b16 %v1944, %v1942
  %v2695 = vpack.c.b16 %v1947, %v1945
  %v2696 = vpack.c.b16 %v1948, %v1946
  %v2697 = vpack.c.b16 %v1951, %v1949
  %v2698 = vpack.c.b16 %v1952, %v1950
  %v2699 = vpack.c.b16 %v1955, %v1953
  %v2700 = vpack.c.b16 %v1956, %v1954
  %v2701 = vpack.c.b16 %v1959, %v1957
  %v2702 = vpack.c.b16 %v1960, %v1958
  %v2703 = vpack.c.b16 %v1963, %v1961
  %v2704 = vpack.c.b16 %v1964, %v1962
  %v2705 = vpack.c.b16 %v1967, %v1965
  %v2706 = vpack.c.b16 %v1968, %v1966
  %v2707 = vpack.c.b16 %v1971, %v1969
  %v2708 = vpack.c.b16 %v1972, %v1970
  %v2709 = vpack.c.b16 %v1975, %v1973
  %v2710 = vpack.c.b16 %v1976, %v1974
  %v2711 = vpack.c.b16 %v1979, %v1977
  %v2712 = vpack.c.b16 %v1980, %v1978
  %v2713 = vpack.c.b16 %v1983, %v1981
  %v2714 = vpack.c.b16 %v1984, %v1982
  %v2715 = vpack.c.b16 %v1987, %v1985
  %v2716 = vpack.c.b16 %v1988, %v1986
  %v2717 = vpack.c.b16 %v1991, %v1989
  %v2718 = vpack.c.b16 %v1992, %v1990
  %v2719 = vpack.c.b16 %v1995, %v1993
  %v2720 = vpack.c.b16 %v1996, %v1994
  %v2721 = vpack.c.b16 %v1999, %v1997
  %v2722 = vpack.c.b16 %v2000, %v1998
  %v2723 = vpack.c.b16 %v2003, %v2001
  %v2724 = vpack.c.b16 %v2004, %v2002
  %v2725 = vpack.c.b16 %v2007, %v2005
  %v2726 = vpack.c.b16 %v2008, %v2006
  %v2727 = vpack.c.b16 %v2011, %v2009
  %v2728 = vpack.c.b16 %v2012, %v2010
  %v2729 = vpack.c.b16 %v2015, %v2013
  %v2730 = vpack.c.b16 %v2016, %v2014
  %v2731 = vpack.c.b16 %v2019, %v2017
  %v2732 = vpack.c.b16 %v2020, %v2018
  %v2733 = vpack.c.b16 %v2023, %v2021
  %v2734 = vpack.c.b16 %v2024, %v2022
  %v2735 = vpack.c.b16 %v2027, %v2025
  %v2736 = vpack.c.b16 %v2028, %v2026
  %v2737 = vpack.c.b16 %v2031, %v2029
  %v2738 = vpack.c.b16 %v2032, %v2030
  %v2739 = vpack.c.b16 %v2035, %v2033
  %v2740 = vpack.c.b16 %v2036, %v2034
  %v2741 = vpack.c.b16 %v2039, %v2037
  %v2742 = vpack.c.b16 %v2040, %v2038
  %v2743 = vpack.c.b16 %v2043, %v2041
  %v2744 = vpack.c.b16 %v2044, %v2042
  %v2745 = vpack.c.b16 %v2047, %v2045
  %v2746 = vpack.c.b16 %v2048, %v2046
  %v2747 = vpack.c.b16 %v2051, %v2049
  %v2748 = vpack.c.b16 %v2052, %v2050
  %v2749 = vpack.c.b16 %v2055, %v2053
  %v2750 = vpack.c.b16 %v2056, %v2054
  %v2751 = vpack.c.b16 %v2059, %v2057
  %v2752 = vpack.c.b16 %v2060, %v2058
  %v2753 = vpack.c.b16 %v2063, %v2061
  %v2754 = vpack.c.b16 %v2064, %v2062
  %v2755 = vpack.c.b16 %v2067, %v2065
  %v2756 = vpack.c.b16 %v2068, %v2066
  %v2757 = vpack.c.b16 %v2071, %v2069
  %v2758 = vpack.c.b16 %v2072, %v2070
  %v2759 = vpack.c.b16 %v2075, %v2073
  %v2760 = vpack.c.b16 %v2076, %v2074
  %v2761 = vpack.c.b16 %v2079, %v2077
  %v2762 = vpack.c.b16 %v2080, %v2078
  %v2763 = vpack.c.b16 %v2083, %v2081
  %v2764 = vpack.c.b16 %v2084, %v2082
  %v2765 = vpack.c.b16 %v2087, %v2085
  %v2766 = vpack.c.b16 %v2088, %v2086
  %v2767 = vpack.c.b16 %v2091, %v2089
  %v2768 = vpack.c.b16 %v2092, %v2090
  %v2769 = vpack.c.b16 %v2095, %v2093
  %v2770 = vpack.c.b16 %v2096, %v2094
  %v2771 = vpack.c.b16 %v2099, %v2097
  %v2772 = vpack.c.b16 %v2100, %v2098
  %v2773 = vpack.c.b16 %v2103, %v2101
  %v2774 = vpack.c.b16 %v2104, %v2102
  %v2775 = vpack.c.b16 %v2107, %v2105
  %v2776 = vpack.c.b16 %v2108, %v2106
  %v2777 = vpack.c.b16 %v2111, %v2109
  %v2778 = vpack.c.b16 %v2112, %v2110
  %v2779 = vpack.c.b16 %v2115, %v2113
  %v2780 = vpack.c.b16 %v2116, %v2114
  %v2781 = vpack.c.b16 %v2119, %v2117
  %v2782 = vpack.c.b16 %v2120, %v2118
  %v2783 = vpack.c.b16 %v2123, %v2121
  %v2784 = vpack.c.b16 %v2124, %v2122
  %v2785 = vpack.c.b16 %v2127, %v2125
  %v2786 = vpack.c.b16 %v2128, %v2126
  %v2787 = vpack.c.b16 %v2131, %v2129
  %v2788 = vpack.c.b16 %v2132, %v2130
  %v2789 = vpack.c.b16 %v2135, %v2133
  %v2790 = vpack.c.b16 %v2136, %v2134
  %v2791 = vpack.c.b16 %v2139, %v2137
  %v2792 = vpack.c.b16 %v2140, %v2138
  %v2793 = vpack.c.b16 %v2143, %v2141
  %v2794 = vpack.c.b16 %v2144, %v2142
  %v2795 = vpack.c.b16 %v2147, %v2145
  %v2796 = vpack.c.b16 %v2148, %v2146
  %v2797 = vpack.c.b16 %v2151, %v2149
  %v2798 = vpack.c.b16 %v2152, %v2150
  %v2799 = vpack.c.b16 %v2155, %v2153
  %v2800 = vpack.c.b16 %v2156, %v2154
  %v2801 = vpack.c.b16 %v2159, %v2157
  %v2802 = vpack.c.b16 %v2160, %v2158
  %v2803 = vpack.c.b16 %v2163, %v2161
  %v2804 = vpack.c.b16 %v2164, %v2162
  %v2805 = vpack.c.b16 %v2167, %v2165
  %v2806 = vpack.c.b16 %v2168, %v2166
  %v2807 = vpack.c.b16 %v2171, %v2169
  %v2808 = vpack.c.b16 %v2172, %v2170
  %v2809 = vpack.c.b16 %v2175, %v2173
  %v2810 = vpack.c.b16 %v2176, %v2174
  %v2811 = vpack.c.b16 %v2179, %v2177
  %v2812 = vpack.c.b16 %v2180, %v2178
  %v2813 = vpack.c.b16 %v2183, %v2181
  %v2814 = vpack.c.b16 %v2184, %v2182
  %v2815 = vpack.c.b16 %v2187, %v2185
  %v2816 = vpack.c.b16 %v2188, %v2186
  %v2817 = vpack.c.b16 %v2191, %v2189
  %v2818 = vpack.c.b16 %v2192, %v2190
  %v2819 = vpack.c.b16 %v2195, %v2193
  %v2820 = vpack.c.b16 %v2196, %v2194
  %v2821 = vpack.c.b16 %v2199, %v2197
  %v2822 = vpack.c.b16 %v2200, %v2198
  %v2823 = vpack.c.b16 %v2203, %v2201
  %v2824 = vpack.c.b16 %v2204, %v2202
  %v2825 = vpack.c.b16 %v2207, %v2205
  %v2826 = vpack.c.b16 %v2208, %v2206
  %v2827 = vpack.c.b16 %v2211, %v2209
  %v2828 = vpack.c.b16 %v2212, %v2210
  %v2829 = vpack.c.b16 %v2215, %v2213
  %v2830 = vpack.c.b16 %v2216, %v2214
  %v2831 = vpack.c.b16 %v2219, %v2217
  %v2832 = vpack.c.b16 %v2220, %v2218
  %v2833 = vpack.c.b16 %v2223, %v2221
  %v2834 = vpack.c.b16 %v2224, %v2222
  %v2835 = vpack.c.b16 %v2227, %v2225
  %v2836 = vpack.c.b16 %v2228, %v2226
  %v2837 = vpack.c.b16 %v2231, %v2229
  %v2838 = vpack.c.b16 %v2232, %v2230
  %v2839 = vpack.c.b16 %v2235, %v2233
  %v2840 = vpack.c.b16 %v2236, %v2234
  %v2841 = vpack.c.b16 %v2239, %v2237
  %v2842 = vpack.c.b16 %v2240, %v2238
  %v2843 = vpack.c.b16 %v2243, %v2241
  %v2844 = vpack.c.b16 %v2244, %v2242
  %v2845 = vpack.c.b16 %v2247, %v2245
  %v2846 = vpack.c.b16 %v2248, %v2246
  %v2847 = vpack.c.b16 %v2251, %v2249
  %v2848 = vpack.c.b16 %v2252, %v2250
  %v2849 = vpack.c.b16 %v2255, %v2253
  %v2850 = vpack.c.b16 %v2256, %v2254
  %v2851 = vpack.c.b16 %v2259, %v2257
  %v2852 = vpack.c.b16 %v2260, %v2258
  %v2853 = vpack.c.b16 %v2263, %v2261
  %v2854 = vpack.c.b16 %v2264, %v2262
  %v2855 = vpack.c.b16 %v2267, %v2265
  %v2856 = vpack.c.b16 %v2268, %v2266
  %v2857 = vpack.c.b16 %v2271, %v2269
  %v2858 = vpack.c.b16 %v2272, %v2270
  %v2859 = vpack.c.b16 %v2275, %v2273
  %v2860 = vpack.c.b16 %v2276, %v2274
  %v2861 = vpack.c.b16 %v2279, %v2277
  %v2862 = vpack.c.b16 %v2280, %v2278
  %v2863 = vpack.c.b16 %v2283, %v2281
  %v2864 = vpack.c.b16 %v2284, %v2282
  %v2865 = vpack.c.b16 %v2287, %v2285
  %v2866 = vpack.c.b16 %v2288, %v2286
  %v2867 = vpack.c.b16 %v2291, %v2289
  %v2868 = vpack.c.b16 %v2292, %v2290
  %v2869 = vpack.c.b16 %v2295, %v2293
  %v2870 = vpack.c.b16 %v2296, %v2294
  %v2871 = vpack.c.b16 %v2299, %v2297
  %v2872 = vpack.c.b16 %v2300, %v2298
  %v2873 = vpack.c.b16 %v2303, %v2301
  %v2874 = vpack.c.b16 %v2304, %v2302
  %v2875 = vpack.c.b16 %v2307, %v2305
  %v2876 = vpack.c.b16 %v2308, %v2306
  %v2877 = vpack.c.b16 %v2311, %v2309
  %v2878 = vpack.c.b16 %v2312, %v2310
  %v2879 = vpack.c.b16 %v2315, %v2313
  %v2880 = vpack.c.b16 %v2316, %v2314
  %v2881 = vpack.c.b16 %v2319, %v2317
  %v2882 = vpack.c.b16 %v2320, %v2318
  %v2883 = vpack.c.b16 %v2323, %v2321
  %v2884 = vpack.c.b16 %v2324, %v2322
  %v2885 = vpack.c.b16 %v2327, %v2325
  %v2886 = vpack.c.b16 %v2328, %v2326
  %v2887 = vpack.c.b16 %v2331, %v2329
  %v2888 = vpack.c.b16 %v2332, %v2330
  %v2889 = vpack.c.b16 %v2335, %v2333
  %v2890 = vpack.c.b16 %v2336, %v2334
  %v2891 = vpack.c.b16 %v2339, %v2337
  %v2892 = vpack.c.b16 %v2340, %v2338
  %v2893 = vpack.c.b16 %v2343, %v2341
  %v2894 = vpack.c.b16 %v2344, %v2342
  %v2895 = vpack.c.b16 %v2347, %v2345
  %v2896 = vpack.c.b16 %v2348, %v2346
  %v2897 = vpack.c.b16 %v2351, %v2349
  %v2898 = vpack.c.b16 %v2352, %v2350
  %v2899 = vpack.c.b16 %v2355, %v2353
  %v2900 = vpack.c.b16 %v2356, %v2354
  %v2901 = vpack.c.b16 %v2359, %v2357
  %v2902 = vpack.c.b16 %v2360, %v2358
  %v2903 = vpack.c.b16 %v2363, %v2361
  %v2904 = vpack.c.b16 %v2364, %v2362
  %v2905 = vpack.c.b16 %v2367, %v2365
  %v2906 = vpack.c.b16 %v2368, %v2366
  %v2907 = vpack.c.b16 %v2371, %v2369
  %v2908 = vpack.c.b16 %v2372, %v2370
  %v2909 = vpack.c.b16 %v2375, %v2373
  %v2910 = vpack.c.b16 %v2376, %v2374
  %v2911 = vpack.c.b16 %v2379, %v2377
  %v2912 = vpack.c.b16 %v2380, %v2378
  %v2913 = vpack.c.b16 %v2383, %v2381
  %v2914 = vpack.c.b16 %v2384, %v2382
  %v2915 = vpack.c.b16 %v2387, %v2385
  %v2916 = vpack.c.b16 %v2388, %v2386
  %v2917 = vpack.c.b16 %v2391, %v2389
  %v2918 = vpack.c.b16 %v2392, %v2390
  %v2919 = vpack.c.b16 %v2395, %v2393
  %v2920 = vpack.c.b16 %v2396, %v2394
  %v2921 = vpack.c.b16 %v2399, %v2397
  %v2922 = vpack.c.b16 %v2400, %v2398
  %v2923 = vpack.c.b16 %v2403, %v2401
  %v2924 = vpack.c.b16 %v2404, %v2402
  %v2925 = vpack.c.b16 %v2407, %v2405
  %v2926 = vpack.c.b16 %v2408, %v2406
  %v2927 = vpack.c.b16 %v2411, %v2409
  %v2928 = vpack.c.b16 %v2412, %v2410
  %v2929 = vpack.c.b16 %v2415, %v2413
  %v2930 = vpack.c.b16 %v2416, %v2414
  %v2931 = vpack.c.b16 %v2419, %v2417
  %v2932 = vpack.c.b16 %v2420, %v2418
  %v2933 = vpack.c.b16 %v2423, %v2421
  %v2934 = vpack.c.b16 %v2424, %v2422
  %v2935 = vpack.c.b16 %v2427, %v2425
  %v2936 = vpack.c.b16 %v2428, %v2426
  %v2937 = vpack.c.b16 %v2431, %v2429
  %v2938 = vpack.c.b16 %v2432, %v2430
  %v2939 = vpack.c.b16 %v2435, %v2433
  %v2940 = vpack.c.b16 %v2436, %v2434
  %v2941 = vpack.c.b16 %v2439, %v2437
  %v2942 = vpack.c.b16 %v2440, %v2438
  %v2943 = vpack.c.b16 %v2443, %v2441
  %v2944 = vpack.c.b16 %v2444, %v2442
  %v2945 = vpack.c.b16 %v2447, %v2445
  %v2946 = vpack.c.b16 %v2448, %v2446
  %v2947 = vpack.c.b16 %v2451, %v2449
  %v2948 = vpack.c.b16 %v2452, %v2450
  %v2949 = vpack.c.b16 %v2455, %v2453
  %v2950 = vpack.c.b16 %v2456, %v2454
  %v2951 = vpack.c.b16 %v2459, %v2457
  %v2952 = vpack.c.b16 %v2460, %v2458
  %v2953 = vpack.c.b16 %v2463, %v2461
  %v2954 = vpack.c.b16 %v2464, %v2462
  %v2955 = vpack.c.b16 %v2467, %v2465
  %v2956 = vpack.c.b16 %v2468, %v2466
  %v2957 = vpack.c.b16 %v2471, %v2469
  %v2958 = vpack.c.b16 %v2472, %v2470
  %v2959 = vpack.c.b16 %v2475, %v2473
  %v2960 = vpack.c.b16 %v2476, %v2474
  %v2961 = vpack.c.b16 %v2479, %v2477
  %v2962 = vpack.c.b16 %v2480, %v2478
  %v2963 = vpack.c.b16 %v2483, %v2481
  %v2964 = vpack.c.b16 %v2484, %v2482
  %v2965 = vpack.c.b16 %v2487, %v2485
  %v2966 = vpack.c.b16 %v2488, %v2486
  %v2967 = vpack.c.b16 %v2491, %v2489
  %v2968 = vpack.c.b16 %v2492, %v2490
  %v2969 = vpack.c.b16 %v2495, %v2493
  %v2970 = vpack.c.b16 %v2496, %v2494
  %v2971 = vpack.c.b16 %v2499, %v2497
  %v2972 = vpack.c.b16 %v2500, %v2498
  %v2973 = vpack.c.b16 %v2503, %v2501
  %v2974 = vpack.c.b16 %v2504, %v2502
  %v2975 = vpack.c.b16 %v2507, %v2505
  %v2976 = vpack.c.b16 %v2508, %v2506
  %v2977 = vpack.c.b16 %v2511, %v2509
  %v2978 = vpack.c.b16 %v2512, %v2510
  %v2979 = vpack.c.b16 %v2515, %v2513
  %v2980 = vpack.c.b16 %v2516, %v2514
  %v2981 = vpack.c.b16 %v2519, %v2517
  %v2982 = vpack.c.b16 %v2520, %v2518
  %v2983 = vpack.c.b16 %v2523, %v2521
  %v2984 = vpack.c.b16 %v2524, %v2522
  %v2985 = vpack.c.b16 %v2527, %v2525
  %v2986 = vpack.c.b16 %v2528, %v2526
  %v2987 = vpack.c.b16 %v2531, %v2529
  %v2988 = vpack.c.b16 %v2532, %v2530
  %v2989 = vpack.c.b16 %v2535, %v2533
  %v2990 = vpack.c.b16 %v2536, %v2534
  %v2991 = vpack.c.b16 %v2539, %v2537
  %v2992 = vpack.c.b16 %v2540, %v2538
  %v2993 = vpack.c.b16 %v2543, %v2541
  %v2994 = vpack.c.b16 %v2544, %v2542
  %v2995 = vpack.c.b16 %v2547, %v2545
  %v2996 = vpack.c.b16 %v2548, %v2546
  %v2997 = vpack.c.b16 %v2551, %v2549
  %v2998 = vpack.c.b16 %v2552, %v2550
  %v2999 = vpack.c.b16 %v2555, %v2553
  %v3000 = vpack.c.b16 %v2556, %v2554
  %v3001 = vpack.c.b16 %v2559, %v2557
  %v3002 = vpack.c.b16 %v2560, %v2558
  %v3003 = vpack.c.b16 %v2563, %v2561
  %v3004 = vpack.c.b16 %v2564, %v2562
  %v3005 = vpack.c.b16 %v2567, %v2565
  %v3006 = vpack.c.b16 %v2568, %v2566
  %v3007 = vpack.c.b16 %v2571, %v2569
  %v3008 = vpack.c.b16 %v2572, %v2570
  %v3009 = vpack.c.b16 %v2575, %v2573
  %v3010 = vpack.c.b16 %v2576, %v2574
  %v3011 = vpack.c.b16 %v2579, %v2577
  %v3012 = vpack.c.b16 %v2580, %v2578
  %v3013 = vpack.c.b16 %v2583, %v2581
  %v3014 = vpack.c.b16 %v2584, %v2582
  %v3015 = vpack.c.b16 %v2587, %v2585
  %v3016 = vpack.c.b16 %v2588, %v2586
  %v3017 = vpack.c.b16 %v2591, %v2589
  %v3018 = vpack.c.b16 %v2592, %v2590
  %v3019 = vpack.c.b16 %v2595, %v2593
  %v3020 = vpack.c.b16 %v2596, %v2594
  %v3021 = vpack.c.b16 %v2599, %v2597
  %v3022 = vpack.c.b16 %v2600, %v2598
  %v3023 = vpack.c.b16 %v2603, %v2601
  %v3024 = vpack.c.b16 %v2604, %v2602
  %v3025 = vpack.c.b16 %v2607, %v2605
  %v3026 = vpack.c.b16 %v2608, %v2606
  %v3027 = vpack.c.b16 %v2611, %v2609
  %v3028 = vpack.c.b16 %v2612, %v2610
  %v3029 = vpack.c.b16 %v2615, %v2613
  %v3030 = vpack.c.b16 %v2616, %v2614
  %v3031 = vpack.c.b16 %v2619, %v2617
  %v3032 = vpack.c.b16 %v2620, %v2618
  %v3033 = vpack.c.b16 %v2623, %v2621
  %v3034 = vpack.c.b16 %v2624, %v2622
  %v3035 = vpack.c.b16 %v2627, %v2625
  %v3036 = vpack.c.b16 %v2628, %v2626
  %v3037 = vpack.c.b16 %v2631, %v2629
  %v3038 = vpack.c.b16 %v2632, %v2630
  %v3039 = vpack.c.b16 %v2635, %v2633
  %v3040 = vpack.c.b16 %v2636, %v2634
  %v3041 = vpack.c.b16 %v2639, %v2637
  %v3042 = vpack.c.b16 %v2640, %v2638
  %v3043 = vpack.c.b16 %v2643, %v2641
  %v3044 = vpack.c.b16 %v2644, %v2642
  %3445 = vmatpush.bf16.msra.mxu0 %v2659
  %3446 = vmatpush.bf16.msra.mxu0 %v2657
  %3447 = vmatpush.bf16.msra.mxu0 %v2655
  %3448 = vmatpush.bf16.msra.mxu0 %v2653
  %3449 = vmatpush.bf16.msra.mxu0 %v2651
  %3450 = vmatpush.bf16.msra.mxu0 %v2649
  %3451 = vmatpush.bf16.msra.mxu0 %v2647
  %3452 = vmatpush.bf16.msra.mxu0 %v2645
  %3453 = vmatmul.bf16.gmra.mxu0 %v1095
  %v3454 = vpop.f32.mrf.mxu0
  %v3455 = vadd.f32 %v597, %v3454
  %v3456 = vpop.f32.mrf.mxu0
  %v3457 = vadd.f32 %v597, %v3456
  %3458 = vmatmul.bf16.gmra.mxu0 %v1120
  %v3459 = vpop.f32.mrf.mxu0
  %v3460 = vadd.f32 %v597, %v3459
  %v3461 = vpop.f32.mrf.mxu0
  %v3462 = vadd.f32 %v597, %v3461
  %3463 = vmatmul.bf16.gmra.mxu0 %v1145
  %v3464 = vpop.f32.mrf.mxu0
  %v3465 = vadd.f32 %v597, %v3464
  %v3466 = vpop.f32.mrf.mxu0
  %v3467 = vadd.f32 %v597, %v3466
  %3468 = vmatmul.bf16.gmra.mxu0 %v1170
  %v3469 = vpop.f32.mrf.mxu0
  %v3470 = vadd.f32 %v597, %v3469
  %v3471 = vpop.f32.mrf.mxu0
  %v3472 = vadd.f32 %v597, %v3471
  %3473 = vmatmul.bf16.gmra.mxu0 %v1195
  %v3474 = vpop.f32.mrf.mxu0
  %v3475 = vadd.f32 %v597, %v3474
  %v3476 = vpop.f32.mrf.mxu0
  %v3477 = vadd.f32 %v597, %v3476
  %3478 = vmatmul.bf16.gmra.mxu0 %v1220
  %v3479 = vpop.f32.mrf.mxu0
  %v3480 = vadd.f32 %v597, %v3479
  %v3481 = vpop.f32.mrf.mxu0
  %v3482 = vadd.f32 %v597, %v3481
  %3483 = vmatmul.bf16.gmra.mxu0 %v1245
  %v3484 = vpop.f32.mrf.mxu0
  %v3485 = vadd.f32 %v597, %v3484
  %v3486 = vpop.f32.mrf.mxu0
  %3487 = vdwg.mxu0
  %3488 = vmatpush.bf16.msra.mxu0 %v2675
  %3489 = vmatpush.bf16.msra.mxu0 %v2673
  %3490 = vmatpush.bf16.msra.mxu0 %v2671
  %3491 = vmatpush.bf16.msra.mxu0 %v2669
  %3492 = vmatpush.bf16.msra.mxu0 %v2667
  %3493 = vmatpush.bf16.msra.mxu0 %v2665
  %3494 = vmatpush.bf16.msra.mxu0 %v2663
  %3495 = vmatpush.bf16.msra.mxu0 %v2661
  %3496 = vmatmul.bf16.gmra.mxu0 %v1096
  %v3497 = vpop.f32.mrf.mxu0
  %v3498 = vadd.f32 %v3455, %v3497
  %v3499 = vpop.f32.mrf.mxu0
  %v3500 = vadd.f32 %v3457, %v3499
  %3501 = vmatmul.bf16.gmra.mxu0 %v1121
  %v3502 = vpop.f32.mrf.mxu0
  %v3503 = vadd.f32 %v3460, %v3502
  %v3504 = vpop.f32.mrf.mxu0
  %v3505 = vadd.f32 %v3462, %v3504
  %3506 = vmatmul.bf16.gmra.mxu0 %v1146
  %v3507 = vpop.f32.mrf.mxu0
  %v3508 = vadd.f32 %v3465, %v3507
  %v3509 = vpop.f32.mrf.mxu0
  %v3510 = vadd.f32 %v3467, %v3509
  %3511 = vmatmul.bf16.gmra.mxu0 %v1171
  %v3512 = vpop.f32.mrf.mxu0
  %v3513 = vadd.f32 %v3470, %v3512
  %v3514 = vpop.f32.mrf.mxu0
  %v3515 = vadd.f32 %v3472, %v3514
  %3516 = vmatmul.bf16.gmra.mxu0 %v1196
  %v3517 = vpop.f32.mrf.mxu0
  %v3518 = vadd.f32 %v3475, %v3517
  %v3519 = vpop.f32.mrf.mxu0
  %v3520 = vadd.f32 %v3477, %v3519
  %3521 = vmatmul.bf16.gmra.mxu0 %v1221
  %v3522 = vpop.f32.mrf.mxu0
  %v3523 = vadd.f32 %v3480, %v3522
  %v3524 = vpop.f32.mrf.mxu0
  %v3525 = vadd.f32 %v3482, %v3524
  %3526 = vmatmul.bf16.gmra.mxu0 %v1246
  %v3527 = vpop.f32.mrf.mxu0
  %v3528 = vadd.f32 %v3485, %v3527
  %v3529 = vpop.f32.mrf.mxu0
  %3530 = vdwg.mxu0
  %3531 = vmatpush.bf16.msra.mxu0 %v2691
  %3532 = vmatpush.bf16.msra.mxu0 %v2689
  %3533 = vmatpush.bf16.msra.mxu0 %v2687
  %3534 = vmatpush.bf16.msra.mxu0 %v2685
  %3535 = vmatpush.bf16.msra.mxu0 %v2683
  %3536 = vmatpush.bf16.msra.mxu0 %v2681
  %3537 = vmatpush.bf16.msra.mxu0 %v2679
  %3538 = vmatpush.bf16.msra.mxu0 %v2677
  %3539 = vmatmul.bf16.gmra.mxu0 %v1097
  %v3540 = vpop.f32.mrf.mxu0
  %v3541 = vadd.f32 %v3498, %v3540
  %v3542 = vpop.f32.mrf.mxu0
  %v3543 = vadd.f32 %v3500, %v3542
  %3544 = vmatmul.bf16.gmra.mxu0 %v1122
  %v3545 = vpop.f32.mrf.mxu0
  %v3546 = vadd.f32 %v3503, %v3545
  %v3547 = vpop.f32.mrf.mxu0
  %v3548 = vadd.f32 %v3505, %v3547
  %3549 = vmatmul.bf16.gmra.mxu0 %v1147
  %v3550 = vpop.f32.mrf.mxu0
  %v3551 = vadd.f32 %v3508, %v3550
  %v3552 = vpop.f32.mrf.mxu0
  %v3553 = vadd.f32 %v3510, %v3552
  %3554 = vmatmul.bf16.gmra.mxu0 %v1172
  %v3555 = vpop.f32.mrf.mxu0
  %v3556 = vadd.f32 %v3513, %v3555
  %v3557 = vpop.f32.mrf.mxu0
  %v3558 = vadd.f32 %v3515, %v3557
  %3559 = vmatmul.bf16.gmra.mxu0 %v1197
  %v3560 = vpop.f32.mrf.mxu0
  %v3561 = vadd.f32 %v3518, %v3560
  %v3562 = vpop.f32.mrf.mxu0
  %v3563 = vadd.f32 %v3520, %v3562
  %3564 = vmatmul.bf16.gmra.mxu0 %v1222
  %v3565 = vpop.f32.mrf.mxu0
  %v3566 = vadd.f32 %v3523, %v3565
  %v3567 = vpop.f32.mrf.mxu0
  %v3568 = vadd.f32 %v3525, %v3567
  %3569 = vmatmul.bf16.gmra.mxu0 %v1247
  %v3570 = vpop.f32.mrf.mxu0
  %v3571 = vadd.f32 %v3528, %v3570
  %v3572 = vpop.f32.mrf.mxu0
  %3573 = vdwg.mxu0
  %3574 = vmatpush.bf16.msra.mxu0 %v2707
  %3575 = vmatpush.bf16.msra.mxu0 %v2705
  %3576 = vmatpush.bf16.msra.mxu0 %v2703
  %3577 = vmatpush.bf16.msra.mxu0 %v2701
  %3578 = vmatpush.bf16.msra.mxu0 %v2699
  %3579 = vmatpush.bf16.msra.mxu0 %v2697
  %3580 = vmatpush.bf16.msra.mxu0 %v2695
  %3581 = vmatpush.bf16.msra.mxu0 %v2693
  %3582 = vmatmul.bf16.gmra.mxu0 %v1098
  %v3583 = vpop.f32.mrf.mxu0
  %v3584 = vadd.f32 %v3541, %v3583
  %v3585 = vpop.f32.mrf.mxu0
  %v3586 = vadd.f32 %v3543, %v3585
  %3587 = vmatmul.bf16.gmra.mxu0 %v1123
  %v3588 = vpop.f32.mrf.mxu0
  %v3589 = vadd.f32 %v3546, %v3588
  %v3590 = vpop.f32.mrf.mxu0
  %v3591 = vadd.f32 %v3548, %v3590
  %3592 = vmatmul.bf16.gmra.mxu0 %v1148
  %v3593 = vpop.f32.mrf.mxu0
  %v3594 = vadd.f32 %v3551, %v3593
  %v3595 = vpop.f32.mrf.mxu0
  %v3596 = vadd.f32 %v3553, %v3595
  %3597 = vmatmul.bf16.gmra.mxu0 %v1173
  %v3598 = vpop.f32.mrf.mxu0
  %v3599 = vadd.f32 %v3556, %v3598
  %v3600 = vpop.f32.mrf.mxu0
  %v3601 = vadd.f32 %v3558, %v3600
  %3602 = vmatmul.bf16.gmra.mxu0 %v1198
  %v3603 = vpop.f32.mrf.mxu0
  %v3604 = vadd.f32 %v3561, %v3603
  %v3605 = vpop.f32.mrf.mxu0
  %v3606 = vadd.f32 %v3563, %v3605
  %3607 = vmatmul.bf16.gmra.mxu0 %v1223
  %v3608 = vpop.f32.mrf.mxu0
  %v3609 = vadd.f32 %v3566, %v3608
  %v3610 = vpop.f32.mrf.mxu0
  %v3611 = vadd.f32 %v3568, %v3610
  %3612 = vmatmul.bf16.gmra.mxu0 %v1248
  %v3613 = vpop.f32.mrf.mxu0
  %v3614 = vadd.f32 %v3571, %v3613
  %v3615 = vpop.f32.mrf.mxu0
  %3616 = vdwg.mxu0
  %3617 = vmatpush.bf16.msra.mxu0 %v2723
  %3618 = vmatpush.bf16.msra.mxu0 %v2721
  %3619 = vmatpush.bf16.msra.mxu0 %v2719
  %3620 = vmatpush.bf16.msra.mxu0 %v2717
  %3621 = vmatpush.bf16.msra.mxu0 %v2715
  %3622 = vmatpush.bf16.msra.mxu0 %v2713
  %3623 = vmatpush.bf16.msra.mxu0 %v2711
  %3624 = vmatpush.bf16.msra.mxu0 %v2709
  %3625 = vmatmul.bf16.gmra.mxu0 %v1099
  %v3626 = vpop.f32.mrf.mxu0
  %v3627 = vadd.f32 %v3584, %v3626
  %v3628 = vpop.f32.mrf.mxu0
  %v3629 = vadd.f32 %v3586, %v3628
  %3630 = vmatmul.bf16.gmra.mxu0 %v1124
  %v3631 = vpop.f32.mrf.mxu0
  %v3632 = vadd.f32 %v3589, %v3631
  %v3633 = vpop.f32.mrf.mxu0
  %v3634 = vadd.f32 %v3591, %v3633
  %3635 = vmatmul.bf16.gmra.mxu0 %v1149
  %v3636 = vpop.f32.mrf.mxu0
  %v3637 = vadd.f32 %v3594, %v3636
  %v3638 = vpop.f32.mrf.mxu0
  %v3639 = vadd.f32 %v3596, %v3638
  %3640 = vmatmul.bf16.gmra.mxu0 %v1174
  %v3641 = vpop.f32.mrf.mxu0
  %v3642 = vadd.f32 %v3599, %v3641
  %v3643 = vpop.f32.mrf.mxu0
  %v3644 = vadd.f32 %v3601, %v3643
  %3645 = vmatmul.bf16.gmra.mxu0 %v1199
  %v3646 = vpop.f32.mrf.mxu0
  %v3647 = vadd.f32 %v3604, %v3646
  %v3648 = vpop.f32.mrf.mxu0
  %v3649 = vadd.f32 %v3606, %v3648
  %3650 = vmatmul.bf16.gmra.mxu0 %v1224
  %v3651 = vpop.f32.mrf.mxu0
  %v3652 = vadd.f32 %v3609, %v3651
  %v3653 = vpop.f32.mrf.mxu0
  %v3654 = vadd.f32 %v3611, %v3653
  %3655 = vmatmul.bf16.gmra.mxu0 %v1249
  %v3656 = vpop.f32.mrf.mxu0
  %v3657 = vadd.f32 %v3614, %v3656
  %v3658 = vpop.f32.mrf.mxu0
  %3659 = vdwg.mxu0
  %3660 = vmatpush.bf16.msra.mxu0 %v2739
  %3661 = vmatpush.bf16.msra.mxu0 %v2737
  %3662 = vmatpush.bf16.msra.mxu0 %v2735
  %3663 = vmatpush.bf16.msra.mxu0 %v2733
  %3664 = vmatpush.bf16.msra.mxu0 %v2731
  %3665 = vmatpush.bf16.msra.mxu0 %v2729
  %3666 = vmatpush.bf16.msra.mxu0 %v2727
  %3667 = vmatpush.bf16.msra.mxu0 %v2725
  %3668 = vmatmul.bf16.gmra.mxu0 %v1100
  %v3669 = vpop.f32.mrf.mxu0
  %v3670 = vadd.f32 %v3627, %v3669
  %v3671 = vpop.f32.mrf.mxu0
  %v3672 = vadd.f32 %v3629, %v3671
  %3673 = vmatmul.bf16.gmra.mxu0 %v1125
  %v3674 = vpop.f32.mrf.mxu0
  %v3675 = vadd.f32 %v3632, %v3674
  %v3676 = vpop.f32.mrf.mxu0
  %v3677 = vadd.f32 %v3634, %v3676
  %3678 = vmatmul.bf16.gmra.mxu0 %v1150
  %v3679 = vpop.f32.mrf.mxu0
  %v3680 = vadd.f32 %v3637, %v3679
  %v3681 = vpop.f32.mrf.mxu0
  %v3682 = vadd.f32 %v3639, %v3681
  %3683 = vmatmul.bf16.gmra.mxu0 %v1175
  %v3684 = vpop.f32.mrf.mxu0
  %v3685 = vadd.f32 %v3642, %v3684
  %v3686 = vpop.f32.mrf.mxu0
  %v3687 = vadd.f32 %v3644, %v3686
  %3688 = vmatmul.bf16.gmra.mxu0 %v1200
  %v3689 = vpop.f32.mrf.mxu0
  %v3690 = vadd.f32 %v3647, %v3689
  %v3691 = vpop.f32.mrf.mxu0
  %v3692 = vadd.f32 %v3649, %v3691
  %3693 = vmatmul.bf16.gmra.mxu0 %v1225
  %v3694 = vpop.f32.mrf.mxu0
  %v3695 = vadd.f32 %v3652, %v3694
  %v3696 = vpop.f32.mrf.mxu0
  %v3697 = vadd.f32 %v3654, %v3696
  %3698 = vmatmul.bf16.gmra.mxu0 %v1250
  %v3699 = vpop.f32.mrf.mxu0
  %v3700 = vadd.f32 %v3657, %v3699
  %v3701 = vpop.f32.mrf.mxu0
  %3702 = vdwg.mxu0
  %3703 = vmatpush.bf16.msra.mxu0 %v2755
  %3704 = vmatpush.bf16.msra.mxu0 %v2753
  %3705 = vmatpush.bf16.msra.mxu0 %v2751
  %3706 = vmatpush.bf16.msra.mxu0 %v2749
  %3707 = vmatpush.bf16.msra.mxu0 %v2747
  %3708 = vmatpush.bf16.msra.mxu0 %v2745
  %3709 = vmatpush.bf16.msra.mxu0 %v2743
  %3710 = vmatpush.bf16.msra.mxu0 %v2741
  %3711 = vmatmul.bf16.gmra.mxu0 %v1101
  %v3712 = vpop.f32.mrf.mxu0
  %v3713 = vadd.f32 %v3670, %v3712
  %v3714 = vpop.f32.mrf.mxu0
  %v3715 = vadd.f32 %v3672, %v3714
  %3716 = vmatmul.bf16.gmra.mxu0 %v1126
  %v3717 = vpop.f32.mrf.mxu0
  %v3718 = vadd.f32 %v3675, %v3717
  %v3719 = vpop.f32.mrf.mxu0
  %v3720 = vadd.f32 %v3677, %v3719
  %3721 = vmatmul.bf16.gmra.mxu0 %v1151
  %v3722 = vpop.f32.mrf.mxu0
  %v3723 = vadd.f32 %v3680, %v3722
  %v3724 = vpop.f32.mrf.mxu0
  %v3725 = vadd.f32 %v3682, %v3724
  %3726 = vmatmul.bf16.gmra.mxu0 %v1176
  %v3727 = vpop.f32.mrf.mxu0
  %v3728 = vadd.f32 %v3685, %v3727
  %v3729 = vpop.f32.mrf.mxu0
  %v3730 = vadd.f32 %v3687, %v3729
  %3731 = vmatmul.bf16.gmra.mxu0 %v1201
  %v3732 = vpop.f32.mrf.mxu0
  %v3733 = vadd.f32 %v3690, %v3732
  %v3734 = vpop.f32.mrf.mxu0
  %v3735 = vadd.f32 %v3692, %v3734
  %3736 = vmatmul.bf16.gmra.mxu0 %v1226
  %v3737 = vpop.f32.mrf.mxu0
  %v3738 = vadd.f32 %v3695, %v3737
  %v3739 = vpop.f32.mrf.mxu0
  %v3740 = vadd.f32 %v3697, %v3739
  %3741 = vmatmul.bf16.gmra.mxu0 %v1251
  %v3742 = vpop.f32.mrf.mxu0
  %v3743 = vadd.f32 %v3700, %v3742
  %v3744 = vpop.f32.mrf.mxu0
  %3745 = vdwg.mxu0
  %3746 = vmatpush.bf16.msra.mxu0 %v2771
  %3747 = vmatpush.bf16.msra.mxu0 %v2769
  %3748 = vmatpush.bf16.msra.mxu0 %v2767
  %3749 = vmatpush.bf16.msra.mxu0 %v2765
  %3750 = vmatpush.bf16.msra.mxu0 %v2763
  %3751 = vmatpush.bf16.msra.mxu0 %v2761
  %3752 = vmatpush.bf16.msra.mxu0 %v2759
  %3753 = vmatpush.bf16.msra.mxu0 %v2757
  %3754 = vmatmul.bf16.gmra.mxu0 %v1102
  %v3755 = vpop.f32.mrf.mxu0
  %v3756 = vadd.f32 %v3713, %v3755
  %v3757 = vpop.f32.mrf.mxu0
  %v3758 = vadd.f32 %v3715, %v3757
  %3759 = vmatmul.bf16.gmra.mxu0 %v1127
  %v3760 = vpop.f32.mrf.mxu0
  %v3761 = vadd.f32 %v3718, %v3760
  %v3762 = vpop.f32.mrf.mxu0
  %v3763 = vadd.f32 %v3720, %v3762
  %3764 = vmatmul.bf16.gmra.mxu0 %v1152
  %v3765 = vpop.f32.mrf.mxu0
  %v3766 = vadd.f32 %v3723, %v3765
  %v3767 = vpop.f32.mrf.mxu0
  %v3768 = vadd.f32 %v3725, %v3767
  %3769 = vmatmul.bf16.gmra.mxu0 %v1177
  %v3770 = vpop.f32.mrf.mxu0
  %v3771 = vadd.f32 %v3728, %v3770
  %v3772 = vpop.f32.mrf.mxu0
  %v3773 = vadd.f32 %v3730, %v3772
  %3774 = vmatmul.bf16.gmra.mxu0 %v1202
  %v3775 = vpop.f32.mrf.mxu0
  %v3776 = vadd.f32 %v3733, %v3775
  %v3777 = vpop.f32.mrf.mxu0
  %v3778 = vadd.f32 %v3735, %v3777
  %3779 = vmatmul.bf16.gmra.mxu0 %v1227
  %v3780 = vpop.f32.mrf.mxu0
  %v3781 = vadd.f32 %v3738, %v3780
  %v3782 = vpop.f32.mrf.mxu0
  %v3783 = vadd.f32 %v3740, %v3782
  %3784 = vmatmul.bf16.gmra.mxu0 %v1252
  %v3785 = vpop.f32.mrf.mxu0
  %v3786 = vadd.f32 %v3743, %v3785
  %v3787 = vpop.f32.mrf.mxu0
  %3788 = vdwg.mxu0
  %3789 = vmatpush.bf16.msra.mxu0 %v2787
  %3790 = vmatpush.bf16.msra.mxu0 %v2785
  %3791 = vmatpush.bf16.msra.mxu0 %v2783
  %3792 = vmatpush.bf16.msra.mxu0 %v2781
  %3793 = vmatpush.bf16.msra.mxu0 %v2779
  %3794 = vmatpush.bf16.msra.mxu0 %v2777
  %3795 = vmatpush.bf16.msra.mxu0 %v2775
  %3796 = vmatpush.bf16.msra.mxu0 %v2773
  %3797 = vmatmul.bf16.gmra.mxu0 %v1103
  %v3798 = vpop.f32.mrf.mxu0
  %v3799 = vadd.f32 %v3756, %v3798
  %v3800 = vpop.f32.mrf.mxu0
  %v3801 = vadd.f32 %v3758, %v3800
  %3802 = vmatmul.bf16.gmra.mxu0 %v1128
  %v3803 = vpop.f32.mrf.mxu0
  %v3804 = vadd.f32 %v3761, %v3803
  %v3805 = vpop.f32.mrf.mxu0
  %v3806 = vadd.f32 %v3763, %v3805
  %3807 = vmatmul.bf16.gmra.mxu0 %v1153
  %v3808 = vpop.f32.mrf.mxu0
  %v3809 = vadd.f32 %v3766, %v3808
  %v3810 = vpop.f32.mrf.mxu0
  %v3811 = vadd.f32 %v3768, %v3810
  %3812 = vmatmul.bf16.gmra.mxu0 %v1178
  %v3813 = vpop.f32.mrf.mxu0
  %v3814 = vadd.f32 %v3771, %v3813
  %v3815 = vpop.f32.mrf.mxu0
  %v3816 = vadd.f32 %v3773, %v3815
  %3817 = vmatmul.bf16.gmra.mxu0 %v1203
  %v3818 = vpop.f32.mrf.mxu0
  %v3819 = vadd.f32 %v3776, %v3818
  %v3820 = vpop.f32.mrf.mxu0
  %v3821 = vadd.f32 %v3778, %v3820
  %3822 = vmatmul.bf16.gmra.mxu0 %v1228
  %v3823 = vpop.f32.mrf.mxu0
  %v3824 = vadd.f32 %v3781, %v3823
  %v3825 = vpop.f32.mrf.mxu0
  %v3826 = vadd.f32 %v3783, %v3825
  %3827 = vmatmul.bf16.gmra.mxu0 %v1253
  %v3828 = vpop.f32.mrf.mxu0
  %v3829 = vadd.f32 %v3786, %v3828
  %v3830 = vpop.f32.mrf.mxu0
  %3831 = vdwg.mxu0
  %3832 = vmatpush.bf16.msra.mxu0 %v2803
  %3833 = vmatpush.bf16.msra.mxu0 %v2801
  %3834 = vmatpush.bf16.msra.mxu0 %v2799
  %3835 = vmatpush.bf16.msra.mxu0 %v2797
  %3836 = vmatpush.bf16.msra.mxu0 %v2795
  %3837 = vmatpush.bf16.msra.mxu0 %v2793
  %3838 = vmatpush.bf16.msra.mxu0 %v2791
  %3839 = vmatpush.bf16.msra.mxu0 %v2789
  %3840 = vmatmul.bf16.gmra.mxu0 %v1104
  %v3841 = vpop.f32.mrf.mxu0
  %v3842 = vadd.f32 %v3799, %v3841
  %v3843 = vpop.f32.mrf.mxu0
  %v3844 = vadd.f32 %v3801, %v3843
  %3845 = vmatmul.bf16.gmra.mxu0 %v1129
  %v3846 = vpop.f32.mrf.mxu0
  %v3847 = vadd.f32 %v3804, %v3846
  %v3848 = vpop.f32.mrf.mxu0
  %v3849 = vadd.f32 %v3806, %v3848
  %3850 = vmatmul.bf16.gmra.mxu0 %v1154
  %v3851 = vpop.f32.mrf.mxu0
  %v3852 = vadd.f32 %v3809, %v3851
  %v3853 = vpop.f32.mrf.mxu0
  %v3854 = vadd.f32 %v3811, %v3853
  %3855 = vmatmul.bf16.gmra.mxu0 %v1179
  %v3856 = vpop.f32.mrf.mxu0
  %v3857 = vadd.f32 %v3814, %v3856
  %v3858 = vpop.f32.mrf.mxu0
  %v3859 = vadd.f32 %v3816, %v3858
  %3860 = vmatmul.bf16.gmra.mxu0 %v1204
  %v3861 = vpop.f32.mrf.mxu0
  %v3862 = vadd.f32 %v3819, %v3861
  %v3863 = vpop.f32.mrf.mxu0
  %v3864 = vadd.f32 %v3821, %v3863
  %3865 = vmatmul.bf16.gmra.mxu0 %v1229
  %v3866 = vpop.f32.mrf.mxu0
  %v3867 = vadd.f32 %v3824, %v3866
  %v3868 = vpop.f32.mrf.mxu0
  %v3869 = vadd.f32 %v3826, %v3868
  %3870 = vmatmul.bf16.gmra.mxu0 %v1254
  %v3871 = vpop.f32.mrf.mxu0
  %v3872 = vadd.f32 %v3829, %v3871
  %v3873 = vpop.f32.mrf.mxu0
  %3874 = vdwg.mxu0
  %3875 = vmatpush.bf16.msra.mxu0 %v2819
  %3876 = vmatpush.bf16.msra.mxu0 %v2817
  %3877 = vmatpush.bf16.msra.mxu0 %v2815
  %3878 = vmatpush.bf16.msra.mxu0 %v2813
  %3879 = vmatpush.bf16.msra.mxu0 %v2811
  %3880 = vmatpush.bf16.msra.mxu0 %v2809
  %3881 = vmatpush.bf16.msra.mxu0 %v2807
  %3882 = vmatpush.bf16.msra.mxu0 %v2805
  %3883 = vmatmul.bf16.gmra.mxu0 %v1105
  %v3884 = vpop.f32.mrf.mxu0
  %v3885 = vadd.f32 %v3842, %v3884
  %v3886 = vpop.f32.mrf.mxu0
  %v3887 = vadd.f32 %v3844, %v3886
  %3888 = vmatmul.bf16.gmra.mxu0 %v1130
  %v3889 = vpop.f32.mrf.mxu0
  %v3890 = vadd.f32 %v3847, %v3889
  %v3891 = vpop.f32.mrf.mxu0
  %v3892 = vadd.f32 %v3849, %v3891
  %3893 = vmatmul.bf16.gmra.mxu0 %v1155
  %v3894 = vpop.f32.mrf.mxu0
  %v3895 = vadd.f32 %v3852, %v3894
  %v3896 = vpop.f32.mrf.mxu0
  %v3897 = vadd.f32 %v3854, %v3896
  %3898 = vmatmul.bf16.gmra.mxu0 %v1180
  %v3899 = vpop.f32.mrf.mxu0
  %v3900 = vadd.f32 %v3857, %v3899
  %v3901 = vpop.f32.mrf.mxu0
  %v3902 = vadd.f32 %v3859, %v3901
  %3903 = vmatmul.bf16.gmra.mxu0 %v1205
  %v3904 = vpop.f32.mrf.mxu0
  %v3905 = vadd.f32 %v3862, %v3904
  %v3906 = vpop.f32.mrf.mxu0
  %v3907 = vadd.f32 %v3864, %v3906
  %3908 = vmatmul.bf16.gmra.mxu0 %v1230
  %v3909 = vpop.f32.mrf.mxu0
  %v3910 = vadd.f32 %v3867, %v3909
  %v3911 = vpop.f32.mrf.mxu0
  %v3912 = vadd.f32 %v3869, %v3911
  %3913 = vmatmul.bf16.gmra.mxu0 %v1255
  %v3914 = vpop.f32.mrf.mxu0
  %v3915 = vadd.f32 %v3872, %v3914
  %v3916 = vpop.f32.mrf.mxu0
  %3917 = vdwg.mxu0
  %3918 = vmatpush.bf16.msra.mxu0 %v2835
  %3919 = vmatpush.bf16.msra.mxu0 %v2833
  %3920 = vmatpush.bf16.msra.mxu0 %v2831
  %3921 = vmatpush.bf16.msra.mxu0 %v2829
  %3922 = vmatpush.bf16.msra.mxu0 %v2827
  %3923 = vmatpush.bf16.msra.mxu0 %v2825
  %3924 = vmatpush.bf16.msra.mxu0 %v2823
  %3925 = vmatpush.bf16.msra.mxu0 %v2821
  %3926 = vmatmul.bf16.gmra.mxu0 %v1106
  %v3927 = vpop.f32.mrf.mxu0
  %v3928 = vadd.f32 %v3885, %v3927
  %v3929 = vpop.f32.mrf.mxu0
  %v3930 = vadd.f32 %v3887, %v3929
  %3931 = vmatmul.bf16.gmra.mxu0 %v1131
  %v3932 = vpop.f32.mrf.mxu0
  %v3933 = vadd.f32 %v3890, %v3932
  %v3934 = vpop.f32.mrf.mxu0
  %v3935 = vadd.f32 %v3892, %v3934
  %3936 = vmatmul.bf16.gmra.mxu0 %v1156
  %v3937 = vpop.f32.mrf.mxu0
  %v3938 = vadd.f32 %v3895, %v3937
  %v3939 = vpop.f32.mrf.mxu0
  %v3940 = vadd.f32 %v3897, %v3939
  %3941 = vmatmul.bf16.gmra.mxu0 %v1181
  %v3942 = vpop.f32.mrf.mxu0
  %v3943 = vadd.f32 %v3900, %v3942
  %v3944 = vpop.f32.mrf.mxu0
  %v3945 = vadd.f32 %v3902, %v3944
  %3946 = vmatmul.bf16.gmra.mxu0 %v1206
  %v3947 = vpop.f32.mrf.mxu0
  %v3948 = vadd.f32 %v3905, %v3947
  %v3949 = vpop.f32.mrf.mxu0
  %v3950 = vadd.f32 %v3907, %v3949
  %3951 = vmatmul.bf16.gmra.mxu0 %v1231
  %v3952 = vpop.f32.mrf.mxu0
  %v3953 = vadd.f32 %v3910, %v3952
  %v3954 = vpop.f32.mrf.mxu0
  %v3955 = vadd.f32 %v3912, %v3954
  %3956 = vmatmul.bf16.gmra.mxu0 %v1256
  %v3957 = vpop.f32.mrf.mxu0
  %v3958 = vadd.f32 %v3915, %v3957
  %v3959 = vpop.f32.mrf.mxu0
  %3960 = vdwg.mxu0
  %3961 = vmatpush.bf16.msra.mxu0 %v2851
  %3962 = vmatpush.bf16.msra.mxu0 %v2849
  %3963 = vmatpush.bf16.msra.mxu0 %v2847
  %3964 = vmatpush.bf16.msra.mxu0 %v2845
  %3965 = vmatpush.bf16.msra.mxu0 %v2843
  %3966 = vmatpush.bf16.msra.mxu0 %v2841
  %3967 = vmatpush.bf16.msra.mxu0 %v2839
  %3968 = vmatpush.bf16.msra.mxu0 %v2837
  %3969 = vmatmul.bf16.gmra.mxu0 %v1107
  %v3970 = vpop.f32.mrf.mxu0
  %v3971 = vadd.f32 %v3928, %v3970
  %v3972 = vpop.f32.mrf.mxu0
  %v3973 = vadd.f32 %v3930, %v3972
  %3974 = vmatmul.bf16.gmra.mxu0 %v1132
  %v3975 = vpop.f32.mrf.mxu0
  %v3976 = vadd.f32 %v3933, %v3975
  %v3977 = vpop.f32.mrf.mxu0
  %v3978 = vadd.f32 %v3935, %v3977
  %3979 = vmatmul.bf16.gmra.mxu0 %v1157
  %v3980 = vpop.f32.mrf.mxu0
  %v3981 = vadd.f32 %v3938, %v3980
  %v3982 = vpop.f32.mrf.mxu0
  %v3983 = vadd.f32 %v3940, %v3982
  %3984 = vmatmul.bf16.gmra.mxu0 %v1182
  %v3985 = vpop.f32.mrf.mxu0
  %v3986 = vadd.f32 %v3943, %v3985
  %v3987 = vpop.f32.mrf.mxu0
  %v3988 = vadd.f32 %v3945, %v3987
  %3989 = vmatmul.bf16.gmra.mxu0 %v1207
  %v3990 = vpop.f32.mrf.mxu0
  %v3991 = vadd.f32 %v3948, %v3990
  %v3992 = vpop.f32.mrf.mxu0
  %v3993 = vadd.f32 %v3950, %v3992
  %3994 = vmatmul.bf16.gmra.mxu0 %v1232
  %v3995 = vpop.f32.mrf.mxu0
  %v3996 = vadd.f32 %v3953, %v3995
  %v3997 = vpop.f32.mrf.mxu0
  %v3998 = vadd.f32 %v3955, %v3997
  %3999 = vmatmul.bf16.gmra.mxu0 %v1257
  %v4000 = vpop.f32.mrf.mxu0
  %v4001 = vadd.f32 %v3958, %v4000
  %v4002 = vpop.f32.mrf.mxu0
  %4003 = vdwg.mxu0
  %4004 = vmatpush.bf16.msra.mxu0 %v2867
  %4005 = vmatpush.bf16.msra.mxu0 %v2865
  %4006 = vmatpush.bf16.msra.mxu0 %v2863
  %4007 = vmatpush.bf16.msra.mxu0 %v2861
  %4008 = vmatpush.bf16.msra.mxu0 %v2859
  %4009 = vmatpush.bf16.msra.mxu0 %v2857
  %4010 = vmatpush.bf16.msra.mxu0 %v2855
  %4011 = vmatpush.bf16.msra.mxu0 %v2853
  %4012 = vmatmul.bf16.gmra.mxu0 %v1108
  %v4013 = vpop.f32.mrf.mxu0
  %v4014 = vadd.f32 %v3971, %v4013
  %v4015 = vpop.f32.mrf.mxu0
  %v4016 = vadd.f32 %v3973, %v4015
  %4017 = vmatmul.bf16.gmra.mxu0 %v1133
  %v4018 = vpop.f32.mrf.mxu0
  %v4019 = vadd.f32 %v3976, %v4018
  %v4020 = vpop.f32.mrf.mxu0
  %v4021 = vadd.f32 %v3978, %v4020
  %4022 = vmatmul.bf16.gmra.mxu0 %v1158
  %v4023 = vpop.f32.mrf.mxu0
  %v4024 = vadd.f32 %v3981, %v4023
  %v4025 = vpop.f32.mrf.mxu0
  %v4026 = vadd.f32 %v3983, %v4025
  %4027 = vmatmul.bf16.gmra.mxu0 %v1183
  %v4028 = vpop.f32.mrf.mxu0
  %v4029 = vadd.f32 %v3986, %v4028
  %v4030 = vpop.f32.mrf.mxu0
  %v4031 = vadd.f32 %v3988, %v4030
  %4032 = vmatmul.bf16.gmra.mxu0 %v1208
  %v4033 = vpop.f32.mrf.mxu0
  %v4034 = vadd.f32 %v3991, %v4033
  %v4035 = vpop.f32.mrf.mxu0
  %v4036 = vadd.f32 %v3993, %v4035
  %4037 = vmatmul.bf16.gmra.mxu0 %v1233
  %v4038 = vpop.f32.mrf.mxu0
  %v4039 = vadd.f32 %v3996, %v4038
  %v4040 = vpop.f32.mrf.mxu0
  %v4041 = vadd.f32 %v3998, %v4040
  %4042 = vmatmul.bf16.gmra.mxu0 %v1258
  %v4043 = vpop.f32.mrf.mxu0
  %v4044 = vadd.f32 %v4001, %v4043
  %v4045 = vpop.f32.mrf.mxu0
  %4046 = vdwg.mxu0
  %4047 = vmatpush.bf16.msra.mxu0 %v2883
  %4048 = vmatpush.bf16.msra.mxu0 %v2881
  %4049 = vmatpush.bf16.msra.mxu0 %v2879
  %4050 = vmatpush.bf16.msra.mxu0 %v2877
  %4051 = vmatpush.bf16.msra.mxu0 %v2875
  %4052 = vmatpush.bf16.msra.mxu0 %v2873
  %4053 = vmatpush.bf16.msra.mxu0 %v2871
  %4054 = vmatpush.bf16.msra.mxu0 %v2869
  %4055 = vmatmul.bf16.gmra.mxu0 %v1109
  %v4056 = vpop.f32.mrf.mxu0
  %v4057 = vadd.f32 %v4014, %v4056
  %v4058 = vpop.f32.mrf.mxu0
  %v4059 = vadd.f32 %v4016, %v4058
  %4060 = vmatmul.bf16.gmra.mxu0 %v1134
  %v4061 = vpop.f32.mrf.mxu0
  %v4062 = vadd.f32 %v4019, %v4061
  %v4063 = vpop.f32.mrf.mxu0
  %v4064 = vadd.f32 %v4021, %v4063
  %4065 = vmatmul.bf16.gmra.mxu0 %v1159
  %v4066 = vpop.f32.mrf.mxu0
  %v4067 = vadd.f32 %v4024, %v4066
  %v4068 = vpop.f32.mrf.mxu0
  %v4069 = vadd.f32 %v4026, %v4068
  %4070 = vmatmul.bf16.gmra.mxu0 %v1184
  %v4071 = vpop.f32.mrf.mxu0
  %v4072 = vadd.f32 %v4029, %v4071
  %v4073 = vpop.f32.mrf.mxu0
  %v4074 = vadd.f32 %v4031, %v4073
  %4075 = vmatmul.bf16.gmra.mxu0 %v1209
  %v4076 = vpop.f32.mrf.mxu0
  %v4077 = vadd.f32 %v4034, %v4076
  %v4078 = vpop.f32.mrf.mxu0
  %v4079 = vadd.f32 %v4036, %v4078
  %4080 = vmatmul.bf16.gmra.mxu0 %v1234
  %v4081 = vpop.f32.mrf.mxu0
  %v4082 = vadd.f32 %v4039, %v4081
  %v4083 = vpop.f32.mrf.mxu0
  %v4084 = vadd.f32 %v4041, %v4083
  %4085 = vmatmul.bf16.gmra.mxu0 %v1259
  %v4086 = vpop.f32.mrf.mxu0
  %v4087 = vadd.f32 %v4044, %v4086
  %v4088 = vpop.f32.mrf.mxu0
  %4089 = vdwg.mxu0
  %4090 = vmatpush.bf16.msra.mxu0 %v2899
  %4091 = vmatpush.bf16.msra.mxu0 %v2897
  %4092 = vmatpush.bf16.msra.mxu0 %v2895
  %4093 = vmatpush.bf16.msra.mxu0 %v2893
  %4094 = vmatpush.bf16.msra.mxu0 %v2891
  %4095 = vmatpush.bf16.msra.mxu0 %v2889
  %4096 = vmatpush.bf16.msra.mxu0 %v2887
  %4097 = vmatpush.bf16.msra.mxu0 %v2885
  %4098 = vmatmul.bf16.gmra.mxu0 %v1110
  %v4099 = vpop.f32.mrf.mxu0
  %v4100 = vadd.f32 %v4057, %v4099
  %v4101 = vpop.f32.mrf.mxu0
  %v4102 = vadd.f32 %v4059, %v4101
  %4103 = vmatmul.bf16.gmra.mxu0 %v1135
  %v4104 = vpop.f32.mrf.mxu0
  %v4105 = vadd.f32 %v4062, %v4104
  %v4106 = vpop.f32.mrf.mxu0
  %v4107 = vadd.f32 %v4064, %v4106
  %4108 = vmatmul.bf16.gmra.mxu0 %v1160
  %v4109 = vpop.f32.mrf.mxu0
  %v4110 = vadd.f32 %v4067, %v4109
  %v4111 = vpop.f32.mrf.mxu0
  %v4112 = vadd.f32 %v4069, %v4111
  %4113 = vmatmul.bf16.gmra.mxu0 %v1185
  %v4114 = vpop.f32.mrf.mxu0
  %v4115 = vadd.f32 %v4072, %v4114
  %v4116 = vpop.f32.mrf.mxu0
  %v4117 = vadd.f32 %v4074, %v4116
  %4118 = vmatmul.bf16.gmra.mxu0 %v1210
  %v4119 = vpop.f32.mrf.mxu0
  %v4120 = vadd.f32 %v4077, %v4119
  %v4121 = vpop.f32.mrf.mxu0
  %v4122 = vadd.f32 %v4079, %v4121
  %4123 = vmatmul.bf16.gmra.mxu0 %v1235
  %v4124 = vpop.f32.mrf.mxu0
  %v4125 = vadd.f32 %v4082, %v4124
  %v4126 = vpop.f32.mrf.mxu0
  %v4127 = vadd.f32 %v4084, %v4126
  %4128 = vmatmul.bf16.gmra.mxu0 %v1260
  %v4129 = vpop.f32.mrf.mxu0
  %v4130 = vadd.f32 %v4087, %v4129
  %v4131 = vpop.f32.mrf.mxu0
  %4132 = vdwg.mxu0
  %4133 = vmatpush.bf16.msra.mxu0 %v2915
  %4134 = vmatpush.bf16.msra.mxu0 %v2913
  %4135 = vmatpush.bf16.msra.mxu0 %v2911
  %4136 = vmatpush.bf16.msra.mxu0 %v2909
  %4137 = vmatpush.bf16.msra.mxu0 %v2907
  %4138 = vmatpush.bf16.msra.mxu0 %v2905
  %4139 = vmatpush.bf16.msra.mxu0 %v2903
  %4140 = vmatpush.bf16.msra.mxu0 %v2901
  %4141 = vmatmul.bf16.gmra.mxu0 %v1111
  %v4142 = vpop.f32.mrf.mxu0
  %v4143 = vadd.f32 %v4100, %v4142
  %v4144 = vpop.f32.mrf.mxu0
  %v4145 = vadd.f32 %v4102, %v4144
  %4146 = vmatmul.bf16.gmra.mxu0 %v1136
  %v4147 = vpop.f32.mrf.mxu0
  %v4148 = vadd.f32 %v4105, %v4147
  %v4149 = vpop.f32.mrf.mxu0
  %v4150 = vadd.f32 %v4107, %v4149
  %4151 = vmatmul.bf16.gmra.mxu0 %v1161
  %v4152 = vpop.f32.mrf.mxu0
  %v4153 = vadd.f32 %v4110, %v4152
  %v4154 = vpop.f32.mrf.mxu0
  %v4155 = vadd.f32 %v4112, %v4154
  %4156 = vmatmul.bf16.gmra.mxu0 %v1186
  %v4157 = vpop.f32.mrf.mxu0
  %v4158 = vadd.f32 %v4115, %v4157
  %v4159 = vpop.f32.mrf.mxu0
  %v4160 = vadd.f32 %v4117, %v4159
  %4161 = vmatmul.bf16.gmra.mxu0 %v1211
  %v4162 = vpop.f32.mrf.mxu0
  %v4163 = vadd.f32 %v4120, %v4162
  %v4164 = vpop.f32.mrf.mxu0
  %v4165 = vadd.f32 %v4122, %v4164
  %4166 = vmatmul.bf16.gmra.mxu0 %v1236
  %v4167 = vpop.f32.mrf.mxu0
  %v4168 = vadd.f32 %v4125, %v4167
  %v4169 = vpop.f32.mrf.mxu0
  %v4170 = vadd.f32 %v4127, %v4169
  %4171 = vmatmul.bf16.gmra.mxu0 %v1261
  %v4172 = vpop.f32.mrf.mxu0
  %v4173 = vadd.f32 %v4130, %v4172
  %v4174 = vpop.f32.mrf.mxu0
  %4175 = vdwg.mxu0
  %4176 = vmatpush.bf16.msra.mxu0 %v2931
  %4177 = vmatpush.bf16.msra.mxu0 %v2929
  %4178 = vmatpush.bf16.msra.mxu0 %v2927
  %4179 = vmatpush.bf16.msra.mxu0 %v2925
  %4180 = vmatpush.bf16.msra.mxu0 %v2923
  %4181 = vmatpush.bf16.msra.mxu0 %v2921
  %4182 = vmatpush.bf16.msra.mxu0 %v2919
  %4183 = vmatpush.bf16.msra.mxu0 %v2917
  %4184 = vmatmul.bf16.gmra.mxu0 %v1112
  %v4185 = vpop.f32.mrf.mxu0
  %v4186 = vadd.f32 %v4143, %v4185
  %v4187 = vpop.f32.mrf.mxu0
  %v4188 = vadd.f32 %v4145, %v4187
  %4189 = vmatmul.bf16.gmra.mxu0 %v1137
  %v4190 = vpop.f32.mrf.mxu0
  %v4191 = vadd.f32 %v4148, %v4190
  %v4192 = vpop.f32.mrf.mxu0
  %v4193 = vadd.f32 %v4150, %v4192
  %4194 = vmatmul.bf16.gmra.mxu0 %v1162
  %v4195 = vpop.f32.mrf.mxu0
  %v4196 = vadd.f32 %v4153, %v4195
  %v4197 = vpop.f32.mrf.mxu0
  %v4198 = vadd.f32 %v4155, %v4197
  %4199 = vmatmul.bf16.gmra.mxu0 %v1187
  %v4200 = vpop.f32.mrf.mxu0
  %v4201 = vadd.f32 %v4158, %v4200
  %v4202 = vpop.f32.mrf.mxu0
  %v4203 = vadd.f32 %v4160, %v4202
  %4204 = vmatmul.bf16.gmra.mxu0 %v1212
  %v4205 = vpop.f32.mrf.mxu0
  %v4206 = vadd.f32 %v4163, %v4205
  %v4207 = vpop.f32.mrf.mxu0
  %v4208 = vadd.f32 %v4165, %v4207
  %4209 = vmatmul.bf16.gmra.mxu0 %v1237
  %v4210 = vpop.f32.mrf.mxu0
  %v4211 = vadd.f32 %v4168, %v4210
  %v4212 = vpop.f32.mrf.mxu0
  %v4213 = vadd.f32 %v4170, %v4212
  %4214 = vmatmul.bf16.gmra.mxu0 %v1262
  %v4215 = vpop.f32.mrf.mxu0
  %v4216 = vadd.f32 %v4173, %v4215
  %v4217 = vpop.f32.mrf.mxu0
  %4218 = vdwg.mxu0
  %4219 = vmatpush.bf16.msra.mxu0 %v2947
  %4220 = vmatpush.bf16.msra.mxu0 %v2945
  %4221 = vmatpush.bf16.msra.mxu0 %v2943
  %4222 = vmatpush.bf16.msra.mxu0 %v2941
  %4223 = vmatpush.bf16.msra.mxu0 %v2939
  %4224 = vmatpush.bf16.msra.mxu0 %v2937
  %4225 = vmatpush.bf16.msra.mxu0 %v2935
  %4226 = vmatpush.bf16.msra.mxu0 %v2933
  %4227 = vmatmul.bf16.gmra.mxu0 %v1113
  %v4228 = vpop.f32.mrf.mxu0
  %v4229 = vadd.f32 %v4186, %v4228
  %v4230 = vpop.f32.mrf.mxu0
  %v4231 = vadd.f32 %v4188, %v4230
  %4232 = vmatmul.bf16.gmra.mxu0 %v1138
  %v4233 = vpop.f32.mrf.mxu0
  %v4234 = vadd.f32 %v4191, %v4233
  %v4235 = vpop.f32.mrf.mxu0
  %v4236 = vadd.f32 %v4193, %v4235
  %4237 = vmatmul.bf16.gmra.mxu0 %v1163
  %v4238 = vpop.f32.mrf.mxu0
  %v4239 = vadd.f32 %v4196, %v4238
  %v4240 = vpop.f32.mrf.mxu0
  %v4241 = vadd.f32 %v4198, %v4240
  %4242 = vmatmul.bf16.gmra.mxu0 %v1188
  %v4243 = vpop.f32.mrf.mxu0
  %v4244 = vadd.f32 %v4201, %v4243
  %v4245 = vpop.f32.mrf.mxu0
  %v4246 = vadd.f32 %v4203, %v4245
  %4247 = vmatmul.bf16.gmra.mxu0 %v1213
  %v4248 = vpop.f32.mrf.mxu0
  %v4249 = vadd.f32 %v4206, %v4248
  %v4250 = vpop.f32.mrf.mxu0
  %v4251 = vadd.f32 %v4208, %v4250
  %4252 = vmatmul.bf16.gmra.mxu0 %v1238
  %v4253 = vpop.f32.mrf.mxu0
  %v4254 = vadd.f32 %v4211, %v4253
  %v4255 = vpop.f32.mrf.mxu0
  %v4256 = vadd.f32 %v4213, %v4255
  %4257 = vmatmul.bf16.gmra.mxu0 %v1263
  %v4258 = vpop.f32.mrf.mxu0
  %v4259 = vadd.f32 %v4216, %v4258
  %v4260 = vpop.f32.mrf.mxu0
  %4261 = vdwg.mxu0
  %4262 = vmatpush.bf16.msra.mxu0 %v2963
  %4263 = vmatpush.bf16.msra.mxu0 %v2961
  %4264 = vmatpush.bf16.msra.mxu0 %v2959
  %4265 = vmatpush.bf16.msra.mxu0 %v2957
  %4266 = vmatpush.bf16.msra.mxu0 %v2955
  %4267 = vmatpush.bf16.msra.mxu0 %v2953
  %4268 = vmatpush.bf16.msra.mxu0 %v2951
  %4269 = vmatpush.bf16.msra.mxu0 %v2949
  %4270 = vmatmul.bf16.gmra.mxu0 %v1114
  %v4271 = vpop.f32.mrf.mxu0
  %v4272 = vadd.f32 %v4229, %v4271
  %v4273 = vpop.f32.mrf.mxu0
  %v4274 = vadd.f32 %v4231, %v4273
  %4275 = vmatmul.bf16.gmra.mxu0 %v1139
  %v4276 = vpop.f32.mrf.mxu0
  %v4277 = vadd.f32 %v4234, %v4276
  %v4278 = vpop.f32.mrf.mxu0
  %v4279 = vadd.f32 %v4236, %v4278
  %4280 = vmatmul.bf16.gmra.mxu0 %v1164
  %v4281 = vpop.f32.mrf.mxu0
  %v4282 = vadd.f32 %v4239, %v4281
  %v4283 = vpop.f32.mrf.mxu0
  %v4284 = vadd.f32 %v4241, %v4283
  %4285 = vmatmul.bf16.gmra.mxu0 %v1189
  %v4286 = vpop.f32.mrf.mxu0
  %v4287 = vadd.f32 %v4244, %v4286
  %v4288 = vpop.f32.mrf.mxu0
  %v4289 = vadd.f32 %v4246, %v4288
  %4290 = vmatmul.bf16.gmra.mxu0 %v1214
  %v4291 = vpop.f32.mrf.mxu0
  %v4292 = vadd.f32 %v4249, %v4291
  %v4293 = vpop.f32.mrf.mxu0
  %v4294 = vadd.f32 %v4251, %v4293
  %4295 = vmatmul.bf16.gmra.mxu0 %v1239
  %v4296 = vpop.f32.mrf.mxu0
  %v4297 = vadd.f32 %v4254, %v4296
  %v4298 = vpop.f32.mrf.mxu0
  %v4299 = vadd.f32 %v4256, %v4298
  %4300 = vmatmul.bf16.gmra.mxu0 %v1264
  %v4301 = vpop.f32.mrf.mxu0
  %v4302 = vadd.f32 %v4259, %v4301
  %v4303 = vpop.f32.mrf.mxu0
  %4304 = vdwg.mxu0
  %4305 = vmatpush.bf16.msra.mxu0 %v2979
  %4306 = vmatpush.bf16.msra.mxu0 %v2977
  %4307 = vmatpush.bf16.msra.mxu0 %v2975
  %4308 = vmatpush.bf16.msra.mxu0 %v2973
  %4309 = vmatpush.bf16.msra.mxu0 %v2971
  %4310 = vmatpush.bf16.msra.mxu0 %v2969
  %4311 = vmatpush.bf16.msra.mxu0 %v2967
  %4312 = vmatpush.bf16.msra.mxu0 %v2965
  %4313 = vmatmul.bf16.gmra.mxu0 %v1115
  %v4314 = vpop.f32.mrf.mxu0
  %v4315 = vadd.f32 %v4272, %v4314
  %v4316 = vpop.f32.mrf.mxu0
  %v4317 = vadd.f32 %v4274, %v4316
  %4318 = vmatmul.bf16.gmra.mxu0 %v1140
  %v4319 = vpop.f32.mrf.mxu0
  %v4320 = vadd.f32 %v4277, %v4319
  %v4321 = vpop.f32.mrf.mxu0
  %v4322 = vadd.f32 %v4279, %v4321
  %4323 = vmatmul.bf16.gmra.mxu0 %v1165
  %v4324 = vpop.f32.mrf.mxu0
  %v4325 = vadd.f32 %v4282, %v4324
  %v4326 = vpop.f32.mrf.mxu0
  %v4327 = vadd.f32 %v4284, %v4326
  %4328 = vmatmul.bf16.gmra.mxu0 %v1190
  %v4329 = vpop.f32.mrf.mxu0
  %v4330 = vadd.f32 %v4287, %v4329
  %v4331 = vpop.f32.mrf.mxu0
  %v4332 = vadd.f32 %v4289, %v4331
  %4333 = vmatmul.bf16.gmra.mxu0 %v1215
  %v4334 = vpop.f32.mrf.mxu0
  %v4335 = vadd.f32 %v4292, %v4334
  %v4336 = vpop.f32.mrf.mxu0
  %v4337 = vadd.f32 %v4294, %v4336
  %4338 = vmatmul.bf16.gmra.mxu0 %v1240
  %v4339 = vpop.f32.mrf.mxu0
  %v4340 = vadd.f32 %v4297, %v4339
  %v4341 = vpop.f32.mrf.mxu0
  %v4342 = vadd.f32 %v4299, %v4341
  %4343 = vmatmul.bf16.gmra.mxu0 %v1265
  %v4344 = vpop.f32.mrf.mxu0
  %v4345 = vadd.f32 %v4302, %v4344
  %v4346 = vpop.f32.mrf.mxu0
  %4347 = vdwg.mxu0
  %4348 = vmatpush.bf16.msra.mxu0 %v2995
  %4349 = vmatpush.bf16.msra.mxu0 %v2993
  %4350 = vmatpush.bf16.msra.mxu0 %v2991
  %4351 = vmatpush.bf16.msra.mxu0 %v2989
  %4352 = vmatpush.bf16.msra.mxu0 %v2987
  %4353 = vmatpush.bf16.msra.mxu0 %v2985
  %4354 = vmatpush.bf16.msra.mxu0 %v2983
  %4355 = vmatpush.bf16.msra.mxu0 %v2981
  %4356 = vmatmul.bf16.gmra.mxu0 %v1116
  %v4357 = vpop.f32.mrf.mxu0
  %v4358 = vadd.f32 %v4315, %v4357
  %v4359 = vpop.f32.mrf.mxu0
  %v4360 = vadd.f32 %v4317, %v4359
  %4361 = vmatmul.bf16.gmra.mxu0 %v1141
  %v4362 = vpop.f32.mrf.mxu0
  %v4363 = vadd.f32 %v4320, %v4362
  %v4364 = vpop.f32.mrf.mxu0
  %v4365 = vadd.f32 %v4322, %v4364
  %4366 = vmatmul.bf16.gmra.mxu0 %v1166
  %v4367 = vpop.f32.mrf.mxu0
  %v4368 = vadd.f32 %v4325, %v4367
  %v4369 = vpop.f32.mrf.mxu0
  %v4370 = vadd.f32 %v4327, %v4369
  %4371 = vmatmul.bf16.gmra.mxu0 %v1191
  %v4372 = vpop.f32.mrf.mxu0
  %v4373 = vadd.f32 %v4330, %v4372
  %v4374 = vpop.f32.mrf.mxu0
  %v4375 = vadd.f32 %v4332, %v4374
  %4376 = vmatmul.bf16.gmra.mxu0 %v1216
  %v4377 = vpop.f32.mrf.mxu0
  %v4378 = vadd.f32 %v4335, %v4377
  %v4379 = vpop.f32.mrf.mxu0
  %v4380 = vadd.f32 %v4337, %v4379
  %4381 = vmatmul.bf16.gmra.mxu0 %v1241
  %v4382 = vpop.f32.mrf.mxu0
  %v4383 = vadd.f32 %v4340, %v4382
  %v4384 = vpop.f32.mrf.mxu0
  %v4385 = vadd.f32 %v4342, %v4384
  %4386 = vmatmul.bf16.gmra.mxu0 %v1266
  %v4387 = vpop.f32.mrf.mxu0
  %v4388 = vadd.f32 %v4345, %v4387
  %v4389 = vpop.f32.mrf.mxu0
  %4390 = vdwg.mxu0
  %4391 = vmatpush.bf16.msra.mxu0 %v3011
  %4392 = vmatpush.bf16.msra.mxu0 %v3009
  %4393 = vmatpush.bf16.msra.mxu0 %v3007
  %4394 = vmatpush.bf16.msra.mxu0 %v3005
  %4395 = vmatpush.bf16.msra.mxu0 %v3003
  %4396 = vmatpush.bf16.msra.mxu0 %v3001
  %4397 = vmatpush.bf16.msra.mxu0 %v2999
  %4398 = vmatpush.bf16.msra.mxu0 %v2997
  %4399 = vmatmul.bf16.gmra.mxu0 %v1117
  %v4400 = vpop.f32.mrf.mxu0
  %v4401 = vadd.f32 %v4358, %v4400
  %v4402 = vpop.f32.mrf.mxu0
  %v4403 = vadd.f32 %v4360, %v4402
  %4404 = vmatmul.bf16.gmra.mxu0 %v1142
  %v4405 = vpop.f32.mrf.mxu0
  %v4406 = vadd.f32 %v4363, %v4405
  %v4407 = vpop.f32.mrf.mxu0
  %v4408 = vadd.f32 %v4365, %v4407
  %4409 = vmatmul.bf16.gmra.mxu0 %v1167
  %v4410 = vpop.f32.mrf.mxu0
  %v4411 = vadd.f32 %v4368, %v4410
  %v4412 = vpop.f32.mrf.mxu0
  %v4413 = vadd.f32 %v4370, %v4412
  %4414 = vmatmul.bf16.gmra.mxu0 %v1192
  %v4415 = vpop.f32.mrf.mxu0
  %v4416 = vadd.f32 %v4373, %v4415
  %v4417 = vpop.f32.mrf.mxu0
  %v4418 = vadd.f32 %v4375, %v4417
  %4419 = vmatmul.bf16.gmra.mxu0 %v1217
  %v4420 = vpop.f32.mrf.mxu0
  %v4421 = vadd.f32 %v4378, %v4420
  %v4422 = vpop.f32.mrf.mxu0
  %v4423 = vadd.f32 %v4380, %v4422
  %4424 = vmatmul.bf16.gmra.mxu0 %v1242
  %v4425 = vpop.f32.mrf.mxu0
  %v4426 = vadd.f32 %v4383, %v4425
  %v4427 = vpop.f32.mrf.mxu0
  %v4428 = vadd.f32 %v4385, %v4427
  %4429 = vmatmul.bf16.gmra.mxu0 %v1267
  %v4430 = vpop.f32.mrf.mxu0
  %v4431 = vadd.f32 %v4388, %v4430
  %v4432 = vpop.f32.mrf.mxu0
  %4433 = vdwg.mxu0
  %4434 = vmatpush.bf16.msra.mxu0 %v3027
  %4435 = vmatpush.bf16.msra.mxu0 %v3025
  %4436 = vmatpush.bf16.msra.mxu0 %v3023
  %4437 = vmatpush.bf16.msra.mxu0 %v3021
  %4438 = vmatpush.bf16.msra.mxu0 %v3019
  %4439 = vmatpush.bf16.msra.mxu0 %v3017
  %4440 = vmatpush.bf16.msra.mxu0 %v3015
  %4441 = vmatpush.bf16.msra.mxu0 %v3013
  %4442 = vmatmul.bf16.gmra.mxu0 %v1118
  %v4443 = vpop.f32.mrf.mxu0
  %v4444 = vadd.f32 %v4401, %v4443
  %v4445 = vpop.f32.mrf.mxu0
  %v4446 = vadd.f32 %v4403, %v4445
  %4447 = vmatmul.bf16.gmra.mxu0 %v1143
  %v4448 = vpop.f32.mrf.mxu0
  %v4449 = vadd.f32 %v4406, %v4448
  %v4450 = vpop.f32.mrf.mxu0
  %v4451 = vadd.f32 %v4408, %v4450
  %4452 = vmatmul.bf16.gmra.mxu0 %v1168
  %v4453 = vpop.f32.mrf.mxu0
  %v4454 = vadd.f32 %v4411, %v4453
  %v4455 = vpop.f32.mrf.mxu0
  %v4456 = vadd.f32 %v4413, %v4455
  %4457 = vmatmul.bf16.gmra.mxu0 %v1193
  %v4458 = vpop.f32.mrf.mxu0
  %v4459 = vadd.f32 %v4416, %v4458
  %v4460 = vpop.f32.mrf.mxu0
  %v4461 = vadd.f32 %v4418, %v4460
  %4462 = vmatmul.bf16.gmra.mxu0 %v1218
  %v4463 = vpop.f32.mrf.mxu0
  %v4464 = vadd.f32 %v4421, %v4463
  %v4465 = vpop.f32.mrf.mxu0
  %v4466 = vadd.f32 %v4423, %v4465
  %4467 = vmatmul.bf16.gmra.mxu0 %v1243
  %v4468 = vpop.f32.mrf.mxu0
  %v4469 = vadd.f32 %v4426, %v4468
  %v4470 = vpop.f32.mrf.mxu0
  %v4471 = vadd.f32 %v4428, %v4470
  %4472 = vmatmul.bf16.gmra.mxu0 %v1268
  %v4473 = vpop.f32.mrf.mxu0
  %v4474 = vadd.f32 %v4431, %v4473
  %v4475 = vpop.f32.mrf.mxu0
  %4476 = vdwg.mxu0
  %4477 = vmatpush.bf16.msra.mxu0 %v3043
  %4478 = vmatpush.bf16.msra.mxu0 %v3041
  %4479 = vmatpush.bf16.msra.mxu0 %v3039
  %4480 = vmatpush.bf16.msra.mxu0 %v3037
  %4481 = vmatpush.bf16.msra.mxu0 %v3035
  %4482 = vmatpush.bf16.msra.mxu0 %v3033
  %4483 = vmatpush.bf16.msra.mxu0 %v3031
  %4484 = vmatpush.bf16.msra.mxu0 %v3029
  %4485 = vmatmul.bf16.gmra.mxu0 %v1119
  %v4486 = vpop.f32.mrf.mxu0
  %v4487 = vadd.f32 %v4444, %v4486
  %v4488 = vpop.f32.mrf.mxu0
  %v4489 = vadd.f32 %v4446, %v4488
  %4490 = vmatmul.bf16.gmra.mxu0 %v1144
  %v4491 = vpop.f32.mrf.mxu0
  %v4492 = vadd.f32 %v4449, %v4491
  %v4493 = vpop.f32.mrf.mxu0
  %v4494 = vadd.f32 %v4451, %v4493
  %4495 = vmatmul.bf16.gmra.mxu0 %v1169
  %v4496 = vpop.f32.mrf.mxu0
  %v4497 = vadd.f32 %v4454, %v4496
  %v4498 = vpop.f32.mrf.mxu0
  %v4499 = vadd.f32 %v4456, %v4498
  %4500 = vmatmul.bf16.gmra.mxu0 %v1194
  %v4501 = vpop.f32.mrf.mxu0
  %v4502 = vadd.f32 %v4459, %v4501
  %v4503 = vpop.f32.mrf.mxu0
  %v4504 = vadd.f32 %v4461, %v4503
  %4505 = vmatmul.bf16.gmra.mxu0 %v1219
  %v4506 = vpop.f32.mrf.mxu0
  %v4507 = vadd.f32 %v4464, %v4506
  %v4508 = vpop.f32.mrf.mxu0
  %v4509 = vadd.f32 %v4466, %v4508
  %4510 = vmatmul.bf16.gmra.mxu0 %v1244
  %v4511 = vpop.f32.mrf.mxu0
  %v4512 = vadd.f32 %v4469, %v4511
  %v4513 = vpop.f32.mrf.mxu0
  %v4514 = vadd.f32 %v4471, %v4513
  %4515 = vmatmul.bf16.gmra.mxu0 %v1269
  %v4516 = vpop.f32.mrf.mxu0
  %v4517 = vadd.f32 %v4474, %v4516
  %v4518 = vpop.f32.mrf.mxu0
  %4519 = vdwg.mxu0
  %4520 = vmatpush.bf16.msra.mxu0 %v2660
  %4521 = vmatpush.bf16.msra.mxu0 %v2658
  %4522 = vmatpush.bf16.msra.mxu0 %v2656
  %4523 = vmatpush.bf16.msra.mxu0 %v2654
  %4524 = vmatpush.bf16.msra.mxu0 %v2652
  %4525 = vmatpush.bf16.msra.mxu0 %v2650
  %4526 = vmatpush.bf16.msra.mxu0 %v2648
  %4527 = vmatpush.bf16.msra.mxu0 %v2646
  %4528 = vmatmul.bf16.gmra.mxu0 %v1095
  %v4529 = vpop.f32.mrf.mxu0
  %v4530 = vadd.f32 %v598, %v4529
  %v4531 = vpop.f32.mrf.mxu0
  %v4532 = vadd.f32 %v598, %v4531
  %4533 = vmatmul.bf16.gmra.mxu0 %v1120
  %v4534 = vpop.f32.mrf.mxu0
  %v4535 = vadd.f32 %v598, %v4534
  %v4536 = vpop.f32.mrf.mxu0
  %v4537 = vadd.f32 %v598, %v4536
  %4538 = vmatmul.bf16.gmra.mxu0 %v1145
  %v4539 = vpop.f32.mrf.mxu0
  %v4540 = vadd.f32 %v598, %v4539
  %v4541 = vpop.f32.mrf.mxu0
  %v4542 = vadd.f32 %v598, %v4541
  %4543 = vmatmul.bf16.gmra.mxu0 %v1170
  %v4544 = vpop.f32.mrf.mxu0
  %v4545 = vadd.f32 %v598, %v4544
  %v4546 = vpop.f32.mrf.mxu0
  %v4547 = vadd.f32 %v598, %v4546
  %4548 = vmatmul.bf16.gmra.mxu0 %v1195
  %v4549 = vpop.f32.mrf.mxu0
  %v4550 = vadd.f32 %v598, %v4549
  %v4551 = vpop.f32.mrf.mxu0
  %v4552 = vadd.f32 %v598, %v4551
  %4553 = vmatmul.bf16.gmra.mxu0 %v1220
  %v4554 = vpop.f32.mrf.mxu0
  %v4555 = vadd.f32 %v598, %v4554
  %v4556 = vpop.f32.mrf.mxu0
  %v4557 = vadd.f32 %v598, %v4556
  %4558 = vmatmul.bf16.gmra.mxu0 %v1245
  %v4559 = vpop.f32.mrf.mxu0
  %v4560 = vadd.f32 %v598, %v4559
  %v4561 = vpop.f32.mrf.mxu0
  %4562 = vdwg.mxu0
  %4563 = vmatpush.bf16.msra.mxu0 %v2676
  %4564 = vmatpush.bf16.msra.mxu0 %v2674
  %4565 = vmatpush.bf16.msra.mxu0 %v2672
  %4566 = vmatpush.bf16.msra.mxu0 %v2670
  %4567 = vmatpush.bf16.msra.mxu0 %v2668
  %4568 = vmatpush.bf16.msra.mxu0 %v2666
  %4569 = vmatpush.bf16.msra.mxu0 %v2664
  %4570 = vmatpush.bf16.msra.mxu0 %v2662
  %4571 = vmatmul.bf16.gmra.mxu0 %v1096
  %v4572 = vpop.f32.mrf.mxu0
  %v4573 = vadd.f32 %v4530, %v4572
  %v4574 = vpop.f32.mrf.mxu0
  %v4575 = vadd.f32 %v4532, %v4574
  %4576 = vmatmul.bf16.gmra.mxu0 %v1121
  %v4577 = vpop.f32.mrf.mxu0
  %v4578 = vadd.f32 %v4535, %v4577
  %v4579 = vpop.f32.mrf.mxu0
  %v4580 = vadd.f32 %v4537, %v4579
  %4581 = vmatmul.bf16.gmra.mxu0 %v1146
  %v4582 = vpop.f32.mrf.mxu0
  %v4583 = vadd.f32 %v4540, %v4582
  %v4584 = vpop.f32.mrf.mxu0
  %v4585 = vadd.f32 %v4542, %v4584
  %4586 = vmatmul.bf16.gmra.mxu0 %v1171
  %v4587 = vpop.f32.mrf.mxu0
  %v4588 = vadd.f32 %v4545, %v4587
  %v4589 = vpop.f32.mrf.mxu0
  %v4590 = vadd.f32 %v4547, %v4589
  %4591 = vmatmul.bf16.gmra.mxu0 %v1196
  %v4592 = vpop.f32.mrf.mxu0
  %v4593 = vadd.f32 %v4550, %v4592
  %v4594 = vpop.f32.mrf.mxu0
  %v4595 = vadd.f32 %v4552, %v4594
  %4596 = vmatmul.bf16.gmra.mxu0 %v1221
  %v4597 = vpop.f32.mrf.mxu0
  %v4598 = vadd.f32 %v4555, %v4597
  %v4599 = vpop.f32.mrf.mxu0
  %v4600 = vadd.f32 %v4557, %v4599
  %4601 = vmatmul.bf16.gmra.mxu0 %v1246
  %v4602 = vpop.f32.mrf.mxu0
  %v4603 = vadd.f32 %v4560, %v4602
  %v4604 = vpop.f32.mrf.mxu0
  %4605 = vdwg.mxu0
  %4606 = vmatpush.bf16.msra.mxu0 %v2692
  %4607 = vmatpush.bf16.msra.mxu0 %v2690
  %4608 = vmatpush.bf16.msra.mxu0 %v2688
  %4609 = vmatpush.bf16.msra.mxu0 %v2686
  %4610 = vmatpush.bf16.msra.mxu0 %v2684
  %4611 = vmatpush.bf16.msra.mxu0 %v2682
  %4612 = vmatpush.bf16.msra.mxu0 %v2680
  %4613 = vmatpush.bf16.msra.mxu0 %v2678
  %4614 = vmatmul.bf16.gmra.mxu0 %v1097
  %v4615 = vpop.f32.mrf.mxu0
  %v4616 = vadd.f32 %v4573, %v4615
  %v4617 = vpop.f32.mrf.mxu0
  %v4618 = vadd.f32 %v4575, %v4617
  %4619 = vmatmul.bf16.gmra.mxu0 %v1122
  %v4620 = vpop.f32.mrf.mxu0
  %v4621 = vadd.f32 %v4578, %v4620
  %v4622 = vpop.f32.mrf.mxu0
  %v4623 = vadd.f32 %v4580, %v4622
  %4624 = vmatmul.bf16.gmra.mxu0 %v1147
  %v4625 = vpop.f32.mrf.mxu0
  %v4626 = vadd.f32 %v4583, %v4625
  %v4627 = vpop.f32.mrf.mxu0
  %v4628 = vadd.f32 %v4585, %v4627
  %4629 = vmatmul.bf16.gmra.mxu0 %v1172
  %v4630 = vpop.f32.mrf.mxu0
  %v4631 = vadd.f32 %v4588, %v4630
  %v4632 = vpop.f32.mrf.mxu0
  %v4633 = vadd.f32 %v4590, %v4632
  %4634 = vmatmul.bf16.gmra.mxu0 %v1197
  %v4635 = vpop.f32.mrf.mxu0
  %v4636 = vadd.f32 %v4593, %v4635
  %v4637 = vpop.f32.mrf.mxu0
  %v4638 = vadd.f32 %v4595, %v4637
  %4639 = vmatmul.bf16.gmra.mxu0 %v1222
  %v4640 = vpop.f32.mrf.mxu0
  %v4641 = vadd.f32 %v4598, %v4640
  %v4642 = vpop.f32.mrf.mxu0
  %v4643 = vadd.f32 %v4600, %v4642
  %4644 = vmatmul.bf16.gmra.mxu0 %v1247
  %v4645 = vpop.f32.mrf.mxu0
  %v4646 = vadd.f32 %v4603, %v4645
  %v4647 = vpop.f32.mrf.mxu0
  %4648 = vdwg.mxu0
  %4649 = vmatpush.bf16.msra.mxu0 %v2708
  %4650 = vmatpush.bf16.msra.mxu0 %v2706
  %4651 = vmatpush.bf16.msra.mxu0 %v2704
  %4652 = vmatpush.bf16.msra.mxu0 %v2702
  %4653 = vmatpush.bf16.msra.mxu0 %v2700
  %4654 = vmatpush.bf16.msra.mxu0 %v2698
  %4655 = vmatpush.bf16.msra.mxu0 %v2696
  %4656 = vmatpush.bf16.msra.mxu0 %v2694
  %4657 = vmatmul.bf16.gmra.mxu0 %v1098
  %v4658 = vpop.f32.mrf.mxu0
  %v4659 = vadd.f32 %v4616, %v4658
  %v4660 = vpop.f32.mrf.mxu0
  %v4661 = vadd.f32 %v4618, %v4660
  %4662 = vmatmul.bf16.gmra.mxu0 %v1123
  %v4663 = vpop.f32.mrf.mxu0
  %v4664 = vadd.f32 %v4621, %v4663
  %v4665 = vpop.f32.mrf.mxu0
  %v4666 = vadd.f32 %v4623, %v4665
  %4667 = vmatmul.bf16.gmra.mxu0 %v1148
  %v4668 = vpop.f32.mrf.mxu0
  %v4669 = vadd.f32 %v4626, %v4668
  %v4670 = vpop.f32.mrf.mxu0
  %v4671 = vadd.f32 %v4628, %v4670
  %4672 = vmatmul.bf16.gmra.mxu0 %v1173
  %v4673 = vpop.f32.mrf.mxu0
  %v4674 = vadd.f32 %v4631, %v4673
  %v4675 = vpop.f32.mrf.mxu0
  %v4676 = vadd.f32 %v4633, %v4675
  %4677 = vmatmul.bf16.gmra.mxu0 %v1198
  %v4678 = vpop.f32.mrf.mxu0
  %v4679 = vadd.f32 %v4636, %v4678
  %v4680 = vpop.f32.mrf.mxu0
  %v4681 = vadd.f32 %v4638, %v4680
  %4682 = vmatmul.bf16.gmra.mxu0 %v1223
  %v4683 = vpop.f32.mrf.mxu0
  %v4684 = vadd.f32 %v4641, %v4683
  %v4685 = vpop.f32.mrf.mxu0
  %v4686 = vadd.f32 %v4643, %v4685
  %4687 = vmatmul.bf16.gmra.mxu0 %v1248
  %v4688 = vpop.f32.mrf.mxu0
  %v4689 = vadd.f32 %v4646, %v4688
  %v4690 = vpop.f32.mrf.mxu0
  %4691 = vdwg.mxu0
  %4692 = vmatpush.bf16.msra.mxu0 %v2724
  %4693 = vmatpush.bf16.msra.mxu0 %v2722
  %4694 = vmatpush.bf16.msra.mxu0 %v2720
  %4695 = vmatpush.bf16.msra.mxu0 %v2718
  %4696 = vmatpush.bf16.msra.mxu0 %v2716
  %4697 = vmatpush.bf16.msra.mxu0 %v2714
  %4698 = vmatpush.bf16.msra.mxu0 %v2712
  %4699 = vmatpush.bf16.msra.mxu0 %v2710
  %4700 = vmatmul.bf16.gmra.mxu0 %v1099
  %v4701 = vpop.f32.mrf.mxu0
  %v4702 = vadd.f32 %v4659, %v4701
  %v4703 = vpop.f32.mrf.mxu0
  %v4704 = vadd.f32 %v4661, %v4703
  %4705 = vmatmul.bf16.gmra.mxu0 %v1124
  %v4706 = vpop.f32.mrf.mxu0
  %v4707 = vadd.f32 %v4664, %v4706
  %v4708 = vpop.f32.mrf.mxu0
  %v4709 = vadd.f32 %v4666, %v4708
  %4710 = vmatmul.bf16.gmra.mxu0 %v1149
  %v4711 = vpop.f32.mrf.mxu0
  %v4712 = vadd.f32 %v4669, %v4711
  %v4713 = vpop.f32.mrf.mxu0
  %v4714 = vadd.f32 %v4671, %v4713
  %4715 = vmatmul.bf16.gmra.mxu0 %v1174
  %v4716 = vpop.f32.mrf.mxu0
  %v4717 = vadd.f32 %v4674, %v4716
  %v4718 = vpop.f32.mrf.mxu0
  %v4719 = vadd.f32 %v4676, %v4718
  %4720 = vmatmul.bf16.gmra.mxu0 %v1199
  %v4721 = vpop.f32.mrf.mxu0
  %v4722 = vadd.f32 %v4679, %v4721
  %v4723 = vpop.f32.mrf.mxu0
  %v4724 = vadd.f32 %v4681, %v4723
  %4725 = vmatmul.bf16.gmra.mxu0 %v1224
  %v4726 = vpop.f32.mrf.mxu0
  %v4727 = vadd.f32 %v4684, %v4726
  %v4728 = vpop.f32.mrf.mxu0
  %v4729 = vadd.f32 %v4686, %v4728
  %4730 = vmatmul.bf16.gmra.mxu0 %v1249
  %v4731 = vpop.f32.mrf.mxu0
  %v4732 = vadd.f32 %v4689, %v4731
  %v4733 = vpop.f32.mrf.mxu0
  %4734 = vdwg.mxu0
  %4735 = vmatpush.bf16.msra.mxu0 %v2740
  %4736 = vmatpush.bf16.msra.mxu0 %v2738
  %4737 = vmatpush.bf16.msra.mxu0 %v2736
  %4738 = vmatpush.bf16.msra.mxu0 %v2734
  %4739 = vmatpush.bf16.msra.mxu0 %v2732
  %4740 = vmatpush.bf16.msra.mxu0 %v2730
  %4741 = vmatpush.bf16.msra.mxu0 %v2728
  %4742 = vmatpush.bf16.msra.mxu0 %v2726
  %4743 = vmatmul.bf16.gmra.mxu0 %v1100
  %v4744 = vpop.f32.mrf.mxu0
  %v4745 = vadd.f32 %v4702, %v4744
  %v4746 = vpop.f32.mrf.mxu0
  %v4747 = vadd.f32 %v4704, %v4746
  %4748 = vmatmul.bf16.gmra.mxu0 %v1125
  %v4749 = vpop.f32.mrf.mxu0
  %v4750 = vadd.f32 %v4707, %v4749
  %v4751 = vpop.f32.mrf.mxu0
  %v4752 = vadd.f32 %v4709, %v4751
  %4753 = vmatmul.bf16.gmra.mxu0 %v1150
  %v4754 = vpop.f32.mrf.mxu0
  %v4755 = vadd.f32 %v4712, %v4754
  %v4756 = vpop.f32.mrf.mxu0
  %v4757 = vadd.f32 %v4714, %v4756
  %4758 = vmatmul.bf16.gmra.mxu0 %v1175
  %v4759 = vpop.f32.mrf.mxu0
  %v4760 = vadd.f32 %v4717, %v4759
  %v4761 = vpop.f32.mrf.mxu0
  %v4762 = vadd.f32 %v4719, %v4761
  %4763 = vmatmul.bf16.gmra.mxu0 %v1200
  %v4764 = vpop.f32.mrf.mxu0
  %v4765 = vadd.f32 %v4722, %v4764
  %v4766 = vpop.f32.mrf.mxu0
  %v4767 = vadd.f32 %v4724, %v4766
  %4768 = vmatmul.bf16.gmra.mxu0 %v1225
  %v4769 = vpop.f32.mrf.mxu0
  %v4770 = vadd.f32 %v4727, %v4769
  %v4771 = vpop.f32.mrf.mxu0
  %v4772 = vadd.f32 %v4729, %v4771
  %4773 = vmatmul.bf16.gmra.mxu0 %v1250
  %v4774 = vpop.f32.mrf.mxu0
  %v4775 = vadd.f32 %v4732, %v4774
  %v4776 = vpop.f32.mrf.mxu0
  %4777 = vdwg.mxu0
  %4778 = vmatpush.bf16.msra.mxu0 %v2756
  %4779 = vmatpush.bf16.msra.mxu0 %v2754
  %4780 = vmatpush.bf16.msra.mxu0 %v2752
  %4781 = vmatpush.bf16.msra.mxu0 %v2750
  %4782 = vmatpush.bf16.msra.mxu0 %v2748
  %4783 = vmatpush.bf16.msra.mxu0 %v2746
  %4784 = vmatpush.bf16.msra.mxu0 %v2744
  %4785 = vmatpush.bf16.msra.mxu0 %v2742
  %4786 = vmatmul.bf16.gmra.mxu0 %v1101
  %v4787 = vpop.f32.mrf.mxu0
  %v4788 = vadd.f32 %v4745, %v4787
  %v4789 = vpop.f32.mrf.mxu0
  %v4790 = vadd.f32 %v4747, %v4789
  %4791 = vmatmul.bf16.gmra.mxu0 %v1126
  %v4792 = vpop.f32.mrf.mxu0
  %v4793 = vadd.f32 %v4750, %v4792
  %v4794 = vpop.f32.mrf.mxu0
  %v4795 = vadd.f32 %v4752, %v4794
  %4796 = vmatmul.bf16.gmra.mxu0 %v1151
  %v4797 = vpop.f32.mrf.mxu0
  %v4798 = vadd.f32 %v4755, %v4797
  %v4799 = vpop.f32.mrf.mxu0
  %v4800 = vadd.f32 %v4757, %v4799
  %4801 = vmatmul.bf16.gmra.mxu0 %v1176
  %v4802 = vpop.f32.mrf.mxu0
  %v4803 = vadd.f32 %v4760, %v4802
  %v4804 = vpop.f32.mrf.mxu0
  %v4805 = vadd.f32 %v4762, %v4804
  %4806 = vmatmul.bf16.gmra.mxu0 %v1201
  %v4807 = vpop.f32.mrf.mxu0
  %v4808 = vadd.f32 %v4765, %v4807
  %v4809 = vpop.f32.mrf.mxu0
  %v4810 = vadd.f32 %v4767, %v4809
  %4811 = vmatmul.bf16.gmra.mxu0 %v1226
  %v4812 = vpop.f32.mrf.mxu0
  %v4813 = vadd.f32 %v4770, %v4812
  %v4814 = vpop.f32.mrf.mxu0
  %v4815 = vadd.f32 %v4772, %v4814
  %4816 = vmatmul.bf16.gmra.mxu0 %v1251
  %v4817 = vpop.f32.mrf.mxu0
  %v4818 = vadd.f32 %v4775, %v4817
  %v4819 = vpop.f32.mrf.mxu0
  %4820 = vdwg.mxu0
  %4821 = vmatpush.bf16.msra.mxu0 %v2772
  %4822 = vmatpush.bf16.msra.mxu0 %v2770
  %4823 = vmatpush.bf16.msra.mxu0 %v2768
  %4824 = vmatpush.bf16.msra.mxu0 %v2766
  %4825 = vmatpush.bf16.msra.mxu0 %v2764
  %4826 = vmatpush.bf16.msra.mxu0 %v2762
  %4827 = vmatpush.bf16.msra.mxu0 %v2760
  %4828 = vmatpush.bf16.msra.mxu0 %v2758
  %4829 = vmatmul.bf16.gmra.mxu0 %v1102
  %v4830 = vpop.f32.mrf.mxu0
  %v4831 = vadd.f32 %v4788, %v4830
  %v4832 = vpop.f32.mrf.mxu0
  %v4833 = vadd.f32 %v4790, %v4832
  %4834 = vmatmul.bf16.gmra.mxu0 %v1127
  %v4835 = vpop.f32.mrf.mxu0
  %v4836 = vadd.f32 %v4793, %v4835
  %v4837 = vpop.f32.mrf.mxu0
  %v4838 = vadd.f32 %v4795, %v4837
  %4839 = vmatmul.bf16.gmra.mxu0 %v1152
  %v4840 = vpop.f32.mrf.mxu0
  %v4841 = vadd.f32 %v4798, %v4840
  %v4842 = vpop.f32.mrf.mxu0
  %v4843 = vadd.f32 %v4800, %v4842
  %4844 = vmatmul.bf16.gmra.mxu0 %v1177
  %v4845 = vpop.f32.mrf.mxu0
  %v4846 = vadd.f32 %v4803, %v4845
  %v4847 = vpop.f32.mrf.mxu0
  %v4848 = vadd.f32 %v4805, %v4847
  %4849 = vmatmul.bf16.gmra.mxu0 %v1202
  %v4850 = vpop.f32.mrf.mxu0
  %v4851 = vadd.f32 %v4808, %v4850
  %v4852 = vpop.f32.mrf.mxu0
  %v4853 = vadd.f32 %v4810, %v4852
  %4854 = vmatmul.bf16.gmra.mxu0 %v1227
  %v4855 = vpop.f32.mrf.mxu0
  %v4856 = vadd.f32 %v4813, %v4855
  %v4857 = vpop.f32.mrf.mxu0
  %v4858 = vadd.f32 %v4815, %v4857
  %4859 = vmatmul.bf16.gmra.mxu0 %v1252
  %v4860 = vpop.f32.mrf.mxu0
  %v4861 = vadd.f32 %v4818, %v4860
  %v4862 = vpop.f32.mrf.mxu0
  %4863 = vdwg.mxu0
  %4864 = vmatpush.bf16.msra.mxu0 %v2788
  %4865 = vmatpush.bf16.msra.mxu0 %v2786
  %4866 = vmatpush.bf16.msra.mxu0 %v2784
  %4867 = vmatpush.bf16.msra.mxu0 %v2782
  %4868 = vmatpush.bf16.msra.mxu0 %v2780
  %4869 = vmatpush.bf16.msra.mxu0 %v2778
  %4870 = vmatpush.bf16.msra.mxu0 %v2776
  %4871 = vmatpush.bf16.msra.mxu0 %v2774
  %4872 = vmatmul.bf16.gmra.mxu0 %v1103
  %v4873 = vpop.f32.mrf.mxu0
  %v4874 = vadd.f32 %v4831, %v4873
  %v4875 = vpop.f32.mrf.mxu0
  %v4876 = vadd.f32 %v4833, %v4875
  %4877 = vmatmul.bf16.gmra.mxu0 %v1128
  %v4878 = vpop.f32.mrf.mxu0
  %v4879 = vadd.f32 %v4836, %v4878
  %v4880 = vpop.f32.mrf.mxu0
  %v4881 = vadd.f32 %v4838, %v4880
  %4882 = vmatmul.bf16.gmra.mxu0 %v1153
  %v4883 = vpop.f32.mrf.mxu0
  %v4884 = vadd.f32 %v4841, %v4883
  %v4885 = vpop.f32.mrf.mxu0
  %v4886 = vadd.f32 %v4843, %v4885
  %4887 = vmatmul.bf16.gmra.mxu0 %v1178
  %v4888 = vpop.f32.mrf.mxu0
  %v4889 = vadd.f32 %v4846, %v4888
  %v4890 = vpop.f32.mrf.mxu0
  %v4891 = vadd.f32 %v4848, %v4890
  %4892 = vmatmul.bf16.gmra.mxu0 %v1203
  %v4893 = vpop.f32.mrf.mxu0
  %v4894 = vadd.f32 %v4851, %v4893
  %v4895 = vpop.f32.mrf.mxu0
  %v4896 = vadd.f32 %v4853, %v4895
  %4897 = vmatmul.bf16.gmra.mxu0 %v1228
  %v4898 = vpop.f32.mrf.mxu0
  %v4899 = vadd.f32 %v4856, %v4898
  %v4900 = vpop.f32.mrf.mxu0
  %v4901 = vadd.f32 %v4858, %v4900
  %4902 = vmatmul.bf16.gmra.mxu0 %v1253
  %v4903 = vpop.f32.mrf.mxu0
  %v4904 = vadd.f32 %v4861, %v4903
  %v4905 = vpop.f32.mrf.mxu0
  %4906 = vdwg.mxu0
  %4907 = vmatpush.bf16.msra.mxu0 %v2804
  %4908 = vmatpush.bf16.msra.mxu0 %v2802
  %4909 = vmatpush.bf16.msra.mxu0 %v2800
  %4910 = vmatpush.bf16.msra.mxu0 %v2798
  %4911 = vmatpush.bf16.msra.mxu0 %v2796
  %4912 = vmatpush.bf16.msra.mxu0 %v2794
  %4913 = vmatpush.bf16.msra.mxu0 %v2792
  %4914 = vmatpush.bf16.msra.mxu0 %v2790
  %4915 = vmatmul.bf16.gmra.mxu0 %v1104
  %v4916 = vpop.f32.mrf.mxu0
  %v4917 = vadd.f32 %v4874, %v4916
  %v4918 = vpop.f32.mrf.mxu0
  %v4919 = vadd.f32 %v4876, %v4918
  %4920 = vmatmul.bf16.gmra.mxu0 %v1129
  %v4921 = vpop.f32.mrf.mxu0
  %v4922 = vadd.f32 %v4879, %v4921
  %v4923 = vpop.f32.mrf.mxu0
  %v4924 = vadd.f32 %v4881, %v4923
  %4925 = vmatmul.bf16.gmra.mxu0 %v1154
  %v4926 = vpop.f32.mrf.mxu0
  %v4927 = vadd.f32 %v4884, %v4926
  %v4928 = vpop.f32.mrf.mxu0
  %v4929 = vadd.f32 %v4886, %v4928
  %4930 = vmatmul.bf16.gmra.mxu0 %v1179
  %v4931 = vpop.f32.mrf.mxu0
  %v4932 = vadd.f32 %v4889, %v4931
  %v4933 = vpop.f32.mrf.mxu0
  %v4934 = vadd.f32 %v4891, %v4933
  %4935 = vmatmul.bf16.gmra.mxu0 %v1204
  %v4936 = vpop.f32.mrf.mxu0
  %v4937 = vadd.f32 %v4894, %v4936
  %v4938 = vpop.f32.mrf.mxu0
  %v4939 = vadd.f32 %v4896, %v4938
  %4940 = vmatmul.bf16.gmra.mxu0 %v1229
  %v4941 = vpop.f32.mrf.mxu0
  %v4942 = vadd.f32 %v4899, %v4941
  %v4943 = vpop.f32.mrf.mxu0
  %v4944 = vadd.f32 %v4901, %v4943
  %4945 = vmatmul.bf16.gmra.mxu0 %v1254
  %v4946 = vpop.f32.mrf.mxu0
  %v4947 = vadd.f32 %v4904, %v4946
  %v4948 = vpop.f32.mrf.mxu0
  %4949 = vdwg.mxu0
  %4950 = vmatpush.bf16.msra.mxu0 %v2820
  %4951 = vmatpush.bf16.msra.mxu0 %v2818
  %4952 = vmatpush.bf16.msra.mxu0 %v2816
  %4953 = vmatpush.bf16.msra.mxu0 %v2814
  %4954 = vmatpush.bf16.msra.mxu0 %v2812
  %4955 = vmatpush.bf16.msra.mxu0 %v2810
  %4956 = vmatpush.bf16.msra.mxu0 %v2808
  %4957 = vmatpush.bf16.msra.mxu0 %v2806
  %4958 = vmatmul.bf16.gmra.mxu0 %v1105
  %v4959 = vpop.f32.mrf.mxu0
  %v4960 = vadd.f32 %v4917, %v4959
  %v4961 = vpop.f32.mrf.mxu0
  %v4962 = vadd.f32 %v4919, %v4961
  %4963 = vmatmul.bf16.gmra.mxu0 %v1130
  %v4964 = vpop.f32.mrf.mxu0
  %v4965 = vadd.f32 %v4922, %v4964
  %v4966 = vpop.f32.mrf.mxu0
  %v4967 = vadd.f32 %v4924, %v4966
  %4968 = vmatmul.bf16.gmra.mxu0 %v1155
  %v4969 = vpop.f32.mrf.mxu0
  %v4970 = vadd.f32 %v4927, %v4969
  %v4971 = vpop.f32.mrf.mxu0
  %v4972 = vadd.f32 %v4929, %v4971
  %4973 = vmatmul.bf16.gmra.mxu0 %v1180
  %v4974 = vpop.f32.mrf.mxu0
  %v4975 = vadd.f32 %v4932, %v4974
  %v4976 = vpop.f32.mrf.mxu0
  %v4977 = vadd.f32 %v4934, %v4976
  %4978 = vmatmul.bf16.gmra.mxu0 %v1205
  %v4979 = vpop.f32.mrf.mxu0
  %v4980 = vadd.f32 %v4937, %v4979
  %v4981 = vpop.f32.mrf.mxu0
  %v4982 = vadd.f32 %v4939, %v4981
  %4983 = vmatmul.bf16.gmra.mxu0 %v1230
  %v4984 = vpop.f32.mrf.mxu0
  %v4985 = vadd.f32 %v4942, %v4984
  %v4986 = vpop.f32.mrf.mxu0
  %v4987 = vadd.f32 %v4944, %v4986
  %4988 = vmatmul.bf16.gmra.mxu0 %v1255
  %v4989 = vpop.f32.mrf.mxu0
  %v4990 = vadd.f32 %v4947, %v4989
  %v4991 = vpop.f32.mrf.mxu0
  %4992 = vdwg.mxu0
  %4993 = vmatpush.bf16.msra.mxu0 %v2836
  %4994 = vmatpush.bf16.msra.mxu0 %v2834
  %4995 = vmatpush.bf16.msra.mxu0 %v2832
  %4996 = vmatpush.bf16.msra.mxu0 %v2830
  %4997 = vmatpush.bf16.msra.mxu0 %v2828
  %4998 = vmatpush.bf16.msra.mxu0 %v2826
  %4999 = vmatpush.bf16.msra.mxu0 %v2824
  %5000 = vmatpush.bf16.msra.mxu0 %v2822
  %5001 = vmatmul.bf16.gmra.mxu0 %v1106
  %v5002 = vpop.f32.mrf.mxu0
  %v5003 = vadd.f32 %v4960, %v5002
  %v5004 = vpop.f32.mrf.mxu0
  %v5005 = vadd.f32 %v4962, %v5004
  %5006 = vmatmul.bf16.gmra.mxu0 %v1131
  %v5007 = vpop.f32.mrf.mxu0
  %v5008 = vadd.f32 %v4965, %v5007
  %v5009 = vpop.f32.mrf.mxu0
  %v5010 = vadd.f32 %v4967, %v5009
  %5011 = vmatmul.bf16.gmra.mxu0 %v1156
  %v5012 = vpop.f32.mrf.mxu0
  %v5013 = vadd.f32 %v4970, %v5012
  %v5014 = vpop.f32.mrf.mxu0
  %v5015 = vadd.f32 %v4972, %v5014
  %5016 = vmatmul.bf16.gmra.mxu0 %v1181
  %v5017 = vpop.f32.mrf.mxu0
  %v5018 = vadd.f32 %v4975, %v5017
  %v5019 = vpop.f32.mrf.mxu0
  %v5020 = vadd.f32 %v4977, %v5019
  %5021 = vmatmul.bf16.gmra.mxu0 %v1206
  %v5022 = vpop.f32.mrf.mxu0
  %v5023 = vadd.f32 %v4980, %v5022
  %v5024 = vpop.f32.mrf.mxu0
  %v5025 = vadd.f32 %v4982, %v5024
  %5026 = vmatmul.bf16.gmra.mxu0 %v1231
  %v5027 = vpop.f32.mrf.mxu0
  %v5028 = vadd.f32 %v4985, %v5027
  %v5029 = vpop.f32.mrf.mxu0
  %v5030 = vadd.f32 %v4987, %v5029
  %5031 = vmatmul.bf16.gmra.mxu0 %v1256
  %v5032 = vpop.f32.mrf.mxu0
  %v5033 = vadd.f32 %v4990, %v5032
  %v5034 = vpop.f32.mrf.mxu0
  %5035 = vdwg.mxu0
  %5036 = vmatpush.bf16.msra.mxu0 %v2852
  %5037 = vmatpush.bf16.msra.mxu0 %v2850
  %5038 = vmatpush.bf16.msra.mxu0 %v2848
  %5039 = vmatpush.bf16.msra.mxu0 %v2846
  %5040 = vmatpush.bf16.msra.mxu0 %v2844
  %5041 = vmatpush.bf16.msra.mxu0 %v2842
  %5042 = vmatpush.bf16.msra.mxu0 %v2840
  %5043 = vmatpush.bf16.msra.mxu0 %v2838
  %5044 = vmatmul.bf16.gmra.mxu0 %v1107
  %v5045 = vpop.f32.mrf.mxu0
  %v5046 = vadd.f32 %v5003, %v5045
  %v5047 = vpop.f32.mrf.mxu0
  %v5048 = vadd.f32 %v5005, %v5047
  %5049 = vmatmul.bf16.gmra.mxu0 %v1132
  %v5050 = vpop.f32.mrf.mxu0
  %v5051 = vadd.f32 %v5008, %v5050
  %v5052 = vpop.f32.mrf.mxu0
  %v5053 = vadd.f32 %v5010, %v5052
  %5054 = vmatmul.bf16.gmra.mxu0 %v1157
  %v5055 = vpop.f32.mrf.mxu0
  %v5056 = vadd.f32 %v5013, %v5055
  %v5057 = vpop.f32.mrf.mxu0
  %v5058 = vadd.f32 %v5015, %v5057
  %5059 = vmatmul.bf16.gmra.mxu0 %v1182
  %v5060 = vpop.f32.mrf.mxu0
  %v5061 = vadd.f32 %v5018, %v5060
  %v5062 = vpop.f32.mrf.mxu0
  %v5063 = vadd.f32 %v5020, %v5062
  %5064 = vmatmul.bf16.gmra.mxu0 %v1207
  %v5065 = vpop.f32.mrf.mxu0
  %v5066 = vadd.f32 %v5023, %v5065
  %v5067 = vpop.f32.mrf.mxu0
  %v5068 = vadd.f32 %v5025, %v5067
  %5069 = vmatmul.bf16.gmra.mxu0 %v1232
  %v5070 = vpop.f32.mrf.mxu0
  %v5071 = vadd.f32 %v5028, %v5070
  %v5072 = vpop.f32.mrf.mxu0
  %v5073 = vadd.f32 %v5030, %v5072
  %5074 = vmatmul.bf16.gmra.mxu0 %v1257
  %v5075 = vpop.f32.mrf.mxu0
  %v5076 = vadd.f32 %v5033, %v5075
  %v5077 = vpop.f32.mrf.mxu0
  %5078 = vdwg.mxu0
  %5079 = vmatpush.bf16.msra.mxu0 %v2868
  %5080 = vmatpush.bf16.msra.mxu0 %v2866
  %5081 = vmatpush.bf16.msra.mxu0 %v2864
  %5082 = vmatpush.bf16.msra.mxu0 %v2862
  %5083 = vmatpush.bf16.msra.mxu0 %v2860
  %5084 = vmatpush.bf16.msra.mxu0 %v2858
  %5085 = vmatpush.bf16.msra.mxu0 %v2856
  %5086 = vmatpush.bf16.msra.mxu0 %v2854
  %5087 = vmatmul.bf16.gmra.mxu0 %v1108
  %v5088 = vpop.f32.mrf.mxu0
  %v5089 = vadd.f32 %v5046, %v5088
  %v5090 = vpop.f32.mrf.mxu0
  %v5091 = vadd.f32 %v5048, %v5090
  %5092 = vmatmul.bf16.gmra.mxu0 %v1133
  %v5093 = vpop.f32.mrf.mxu0
  %v5094 = vadd.f32 %v5051, %v5093
  %v5095 = vpop.f32.mrf.mxu0
  %v5096 = vadd.f32 %v5053, %v5095
  %5097 = vmatmul.bf16.gmra.mxu0 %v1158
  %v5098 = vpop.f32.mrf.mxu0
  %v5099 = vadd.f32 %v5056, %v5098
  %v5100 = vpop.f32.mrf.mxu0
  %v5101 = vadd.f32 %v5058, %v5100
  %5102 = vmatmul.bf16.gmra.mxu0 %v1183
  %v5103 = vpop.f32.mrf.mxu0
  %v5104 = vadd.f32 %v5061, %v5103
  %v5105 = vpop.f32.mrf.mxu0
  %v5106 = vadd.f32 %v5063, %v5105
  %5107 = vmatmul.bf16.gmra.mxu0 %v1208
  %v5108 = vpop.f32.mrf.mxu0
  %v5109 = vadd.f32 %v5066, %v5108
  %v5110 = vpop.f32.mrf.mxu0
  %v5111 = vadd.f32 %v5068, %v5110
  %5112 = vmatmul.bf16.gmra.mxu0 %v1233
  %v5113 = vpop.f32.mrf.mxu0
  %v5114 = vadd.f32 %v5071, %v5113
  %v5115 = vpop.f32.mrf.mxu0
  %v5116 = vadd.f32 %v5073, %v5115
  %5117 = vmatmul.bf16.gmra.mxu0 %v1258
  %v5118 = vpop.f32.mrf.mxu0
  %v5119 = vadd.f32 %v5076, %v5118
  %v5120 = vpop.f32.mrf.mxu0
  %5121 = vdwg.mxu0
  %5122 = vmatpush.bf16.msra.mxu0 %v2884
  %5123 = vmatpush.bf16.msra.mxu0 %v2882
  %5124 = vmatpush.bf16.msra.mxu0 %v2880
  %5125 = vmatpush.bf16.msra.mxu0 %v2878
  %5126 = vmatpush.bf16.msra.mxu0 %v2876
  %5127 = vmatpush.bf16.msra.mxu0 %v2874
  %5128 = vmatpush.bf16.msra.mxu0 %v2872
  %5129 = vmatpush.bf16.msra.mxu0 %v2870
  %5130 = vmatmul.bf16.gmra.mxu0 %v1109
  %v5131 = vpop.f32.mrf.mxu0
  %v5132 = vadd.f32 %v5089, %v5131
  %v5133 = vpop.f32.mrf.mxu0
  %v5134 = vadd.f32 %v5091, %v5133
  %5135 = vmatmul.bf16.gmra.mxu0 %v1134
  %v5136 = vpop.f32.mrf.mxu0
  %v5137 = vadd.f32 %v5094, %v5136
  %v5138 = vpop.f32.mrf.mxu0
  %v5139 = vadd.f32 %v5096, %v5138
  %5140 = vmatmul.bf16.gmra.mxu0 %v1159
  %v5141 = vpop.f32.mrf.mxu0
  %v5142 = vadd.f32 %v5099, %v5141
  %v5143 = vpop.f32.mrf.mxu0
  %v5144 = vadd.f32 %v5101, %v5143
  %5145 = vmatmul.bf16.gmra.mxu0 %v1184
  %v5146 = vpop.f32.mrf.mxu0
  %v5147 = vadd.f32 %v5104, %v5146
  %v5148 = vpop.f32.mrf.mxu0
  %v5149 = vadd.f32 %v5106, %v5148
  %5150 = vmatmul.bf16.gmra.mxu0 %v1209
  %v5151 = vpop.f32.mrf.mxu0
  %v5152 = vadd.f32 %v5109, %v5151
  %v5153 = vpop.f32.mrf.mxu0
  %v5154 = vadd.f32 %v5111, %v5153
  %5155 = vmatmul.bf16.gmra.mxu0 %v1234
  %v5156 = vpop.f32.mrf.mxu0
  %v5157 = vadd.f32 %v5114, %v5156
  %v5158 = vpop.f32.mrf.mxu0
  %v5159 = vadd.f32 %v5116, %v5158
  %5160 = vmatmul.bf16.gmra.mxu0 %v1259
  %v5161 = vpop.f32.mrf.mxu0
  %v5162 = vadd.f32 %v5119, %v5161
  %v5163 = vpop.f32.mrf.mxu0
  %5164 = vdwg.mxu0
  %5165 = vmatpush.bf16.msra.mxu0 %v2900
  %5166 = vmatpush.bf16.msra.mxu0 %v2898
  %5167 = vmatpush.bf16.msra.mxu0 %v2896
  %5168 = vmatpush.bf16.msra.mxu0 %v2894
  %5169 = vmatpush.bf16.msra.mxu0 %v2892
  %5170 = vmatpush.bf16.msra.mxu0 %v2890
  %5171 = vmatpush.bf16.msra.mxu0 %v2888
  %5172 = vmatpush.bf16.msra.mxu0 %v2886
  %5173 = vmatmul.bf16.gmra.mxu0 %v1110
  %v5174 = vpop.f32.mrf.mxu0
  %v5175 = vadd.f32 %v5132, %v5174
  %v5176 = vpop.f32.mrf.mxu0
  %v5177 = vadd.f32 %v5134, %v5176
  %5178 = vmatmul.bf16.gmra.mxu0 %v1135
  %v5179 = vpop.f32.mrf.mxu0
  %v5180 = vadd.f32 %v5137, %v5179
  %v5181 = vpop.f32.mrf.mxu0
  %v5182 = vadd.f32 %v5139, %v5181
  %5183 = vmatmul.bf16.gmra.mxu0 %v1160
  %v5184 = vpop.f32.mrf.mxu0
  %v5185 = vadd.f32 %v5142, %v5184
  %v5186 = vpop.f32.mrf.mxu0
  %v5187 = vadd.f32 %v5144, %v5186
  %5188 = vmatmul.bf16.gmra.mxu0 %v1185
  %v5189 = vpop.f32.mrf.mxu0
  %v5190 = vadd.f32 %v5147, %v5189
  %v5191 = vpop.f32.mrf.mxu0
  %v5192 = vadd.f32 %v5149, %v5191
  %5193 = vmatmul.bf16.gmra.mxu0 %v1210
  %v5194 = vpop.f32.mrf.mxu0
  %v5195 = vadd.f32 %v5152, %v5194
  %v5196 = vpop.f32.mrf.mxu0
  %v5197 = vadd.f32 %v5154, %v5196
  %5198 = vmatmul.bf16.gmra.mxu0 %v1235
  %v5199 = vpop.f32.mrf.mxu0
  %v5200 = vadd.f32 %v5157, %v5199
  %v5201 = vpop.f32.mrf.mxu0
  %v5202 = vadd.f32 %v5159, %v5201
  %5203 = vmatmul.bf16.gmra.mxu0 %v1260
  %v5204 = vpop.f32.mrf.mxu0
  %v5205 = vadd.f32 %v5162, %v5204
  %v5206 = vpop.f32.mrf.mxu0
  %5207 = vdwg.mxu0
  %5208 = vmatpush.bf16.msra.mxu0 %v2916
  %5209 = vmatpush.bf16.msra.mxu0 %v2914
  %5210 = vmatpush.bf16.msra.mxu0 %v2912
  %5211 = vmatpush.bf16.msra.mxu0 %v2910
  %5212 = vmatpush.bf16.msra.mxu0 %v2908
  %5213 = vmatpush.bf16.msra.mxu0 %v2906
  %5214 = vmatpush.bf16.msra.mxu0 %v2904
  %5215 = vmatpush.bf16.msra.mxu0 %v2902
  %5216 = vmatmul.bf16.gmra.mxu0 %v1111
  %v5217 = vpop.f32.mrf.mxu0
  %v5218 = vadd.f32 %v5175, %v5217
  %v5219 = vpop.f32.mrf.mxu0
  %v5220 = vadd.f32 %v5177, %v5219
  %5221 = vmatmul.bf16.gmra.mxu0 %v1136
  %v5222 = vpop.f32.mrf.mxu0
  %v5223 = vadd.f32 %v5180, %v5222
  %v5224 = vpop.f32.mrf.mxu0
  %v5225 = vadd.f32 %v5182, %v5224
  %5226 = vmatmul.bf16.gmra.mxu0 %v1161
  %v5227 = vpop.f32.mrf.mxu0
  %v5228 = vadd.f32 %v5185, %v5227
  %v5229 = vpop.f32.mrf.mxu0
  %v5230 = vadd.f32 %v5187, %v5229
  %5231 = vmatmul.bf16.gmra.mxu0 %v1186
  %v5232 = vpop.f32.mrf.mxu0
  %v5233 = vadd.f32 %v5190, %v5232
  %v5234 = vpop.f32.mrf.mxu0
  %v5235 = vadd.f32 %v5192, %v5234
  %5236 = vmatmul.bf16.gmra.mxu0 %v1211
  %v5237 = vpop.f32.mrf.mxu0
  %v5238 = vadd.f32 %v5195, %v5237
  %v5239 = vpop.f32.mrf.mxu0
  %v5240 = vadd.f32 %v5197, %v5239
  %5241 = vmatmul.bf16.gmra.mxu0 %v1236
  %v5242 = vpop.f32.mrf.mxu0
  %v5243 = vadd.f32 %v5200, %v5242
  %v5244 = vpop.f32.mrf.mxu0
  %v5245 = vadd.f32 %v5202, %v5244
  %5246 = vmatmul.bf16.gmra.mxu0 %v1261
  %v5247 = vpop.f32.mrf.mxu0
  %v5248 = vadd.f32 %v5205, %v5247
  %v5249 = vpop.f32.mrf.mxu0
  %5250 = vdwg.mxu0
  %5251 = vmatpush.bf16.msra.mxu0 %v2932
  %5252 = vmatpush.bf16.msra.mxu0 %v2930
  %5253 = vmatpush.bf16.msra.mxu0 %v2928
  %5254 = vmatpush.bf16.msra.mxu0 %v2926
  %5255 = vmatpush.bf16.msra.mxu0 %v2924
  %5256 = vmatpush.bf16.msra.mxu0 %v2922
  %5257 = vmatpush.bf16.msra.mxu0 %v2920
  %5258 = vmatpush.bf16.msra.mxu0 %v2918
  %5259 = vmatmul.bf16.gmra.mxu0 %v1112
  %v5260 = vpop.f32.mrf.mxu0
  %v5261 = vadd.f32 %v5218, %v5260
  %v5262 = vpop.f32.mrf.mxu0
  %v5263 = vadd.f32 %v5220, %v5262
  %5264 = vmatmul.bf16.gmra.mxu0 %v1137
  %v5265 = vpop.f32.mrf.mxu0
  %v5266 = vadd.f32 %v5223, %v5265
  %v5267 = vpop.f32.mrf.mxu0
  %v5268 = vadd.f32 %v5225, %v5267
  %5269 = vmatmul.bf16.gmra.mxu0 %v1162
  %v5270 = vpop.f32.mrf.mxu0
  %v5271 = vadd.f32 %v5228, %v5270
  %v5272 = vpop.f32.mrf.mxu0
  %v5273 = vadd.f32 %v5230, %v5272
  %5274 = vmatmul.bf16.gmra.mxu0 %v1187
  %v5275 = vpop.f32.mrf.mxu0
  %v5276 = vadd.f32 %v5233, %v5275
  %v5277 = vpop.f32.mrf.mxu0
  %v5278 = vadd.f32 %v5235, %v5277
  %5279 = vmatmul.bf16.gmra.mxu0 %v1212
  %v5280 = vpop.f32.mrf.mxu0
  %v5281 = vadd.f32 %v5238, %v5280
  %v5282 = vpop.f32.mrf.mxu0
  %v5283 = vadd.f32 %v5240, %v5282
  %5284 = vmatmul.bf16.gmra.mxu0 %v1237
  %v5285 = vpop.f32.mrf.mxu0
  %v5286 = vadd.f32 %v5243, %v5285
  %v5287 = vpop.f32.mrf.mxu0
  %v5288 = vadd.f32 %v5245, %v5287
  %5289 = vmatmul.bf16.gmra.mxu0 %v1262
  %v5290 = vpop.f32.mrf.mxu0
  %v5291 = vadd.f32 %v5248, %v5290
  %v5292 = vpop.f32.mrf.mxu0
  %5293 = vdwg.mxu0
  %5294 = vmatpush.bf16.msra.mxu0 %v2948
  %5295 = vmatpush.bf16.msra.mxu0 %v2946
  %5296 = vmatpush.bf16.msra.mxu0 %v2944
  %5297 = vmatpush.bf16.msra.mxu0 %v2942
  %5298 = vmatpush.bf16.msra.mxu0 %v2940
  %5299 = vmatpush.bf16.msra.mxu0 %v2938
  %5300 = vmatpush.bf16.msra.mxu0 %v2936
  %5301 = vmatpush.bf16.msra.mxu0 %v2934
  %5302 = vmatmul.bf16.gmra.mxu0 %v1113
  %v5303 = vpop.f32.mrf.mxu0
  %v5304 = vadd.f32 %v5261, %v5303
  %v5305 = vpop.f32.mrf.mxu0
  %v5306 = vadd.f32 %v5263, %v5305
  %5307 = vmatmul.bf16.gmra.mxu0 %v1138
  %v5308 = vpop.f32.mrf.mxu0
  %v5309 = vadd.f32 %v5266, %v5308
  %v5310 = vpop.f32.mrf.mxu0
  %v5311 = vadd.f32 %v5268, %v5310
  %5312 = vmatmul.bf16.gmra.mxu0 %v1163
  %v5313 = vpop.f32.mrf.mxu0
  %v5314 = vadd.f32 %v5271, %v5313
  %v5315 = vpop.f32.mrf.mxu0
  %v5316 = vadd.f32 %v5273, %v5315
  %5317 = vmatmul.bf16.gmra.mxu0 %v1188
  %v5318 = vpop.f32.mrf.mxu0
  %v5319 = vadd.f32 %v5276, %v5318
  %v5320 = vpop.f32.mrf.mxu0
  %v5321 = vadd.f32 %v5278, %v5320
  %5322 = vmatmul.bf16.gmra.mxu0 %v1213
  %v5323 = vpop.f32.mrf.mxu0
  %v5324 = vadd.f32 %v5281, %v5323
  %v5325 = vpop.f32.mrf.mxu0
  %v5326 = vadd.f32 %v5283, %v5325
  %5327 = vmatmul.bf16.gmra.mxu0 %v1238
  %v5328 = vpop.f32.mrf.mxu0
  %v5329 = vadd.f32 %v5286, %v5328
  %v5330 = vpop.f32.mrf.mxu0
  %v5331 = vadd.f32 %v5288, %v5330
  %5332 = vmatmul.bf16.gmra.mxu0 %v1263
  %v5333 = vpop.f32.mrf.mxu0
  %v5334 = vadd.f32 %v5291, %v5333
  %v5335 = vpop.f32.mrf.mxu0
  %5336 = vdwg.mxu0
  %5337 = vmatpush.bf16.msra.mxu0 %v2964
  %5338 = vmatpush.bf16.msra.mxu0 %v2962
  %5339 = vmatpush.bf16.msra.mxu0 %v2960
  %5340 = vmatpush.bf16.msra.mxu0 %v2958
  %5341 = vmatpush.bf16.msra.mxu0 %v2956
  %5342 = vmatpush.bf16.msra.mxu0 %v2954
  %5343 = vmatpush.bf16.msra.mxu0 %v2952
  %5344 = vmatpush.bf16.msra.mxu0 %v2950
  %5345 = vmatmul.bf16.gmra.mxu0 %v1114
  %v5346 = vpop.f32.mrf.mxu0
  %v5347 = vadd.f32 %v5304, %v5346
  %v5348 = vpop.f32.mrf.mxu0
  %v5349 = vadd.f32 %v5306, %v5348
  %5350 = vmatmul.bf16.gmra.mxu0 %v1139
  %v5351 = vpop.f32.mrf.mxu0
  %v5352 = vadd.f32 %v5309, %v5351
  %v5353 = vpop.f32.mrf.mxu0
  %v5354 = vadd.f32 %v5311, %v5353
  %5355 = vmatmul.bf16.gmra.mxu0 %v1164
  %v5356 = vpop.f32.mrf.mxu0
  %v5357 = vadd.f32 %v5314, %v5356
  %v5358 = vpop.f32.mrf.mxu0
  %v5359 = vadd.f32 %v5316, %v5358
  %5360 = vmatmul.bf16.gmra.mxu0 %v1189
  %v5361 = vpop.f32.mrf.mxu0
  %v5362 = vadd.f32 %v5319, %v5361
  %v5363 = vpop.f32.mrf.mxu0
  %v5364 = vadd.f32 %v5321, %v5363
  %5365 = vmatmul.bf16.gmra.mxu0 %v1214
  %v5366 = vpop.f32.mrf.mxu0
  %v5367 = vadd.f32 %v5324, %v5366
  %v5368 = vpop.f32.mrf.mxu0
  %v5369 = vadd.f32 %v5326, %v5368
  %5370 = vmatmul.bf16.gmra.mxu0 %v1239
  %v5371 = vpop.f32.mrf.mxu0
  %v5372 = vadd.f32 %v5329, %v5371
  %v5373 = vpop.f32.mrf.mxu0
  %v5374 = vadd.f32 %v5331, %v5373
  %5375 = vmatmul.bf16.gmra.mxu0 %v1264
  %v5376 = vpop.f32.mrf.mxu0
  %v5377 = vadd.f32 %v5334, %v5376
  %v5378 = vpop.f32.mrf.mxu0
  %5379 = vdwg.mxu0
  %5380 = vmatpush.bf16.msra.mxu0 %v2980
  %5381 = vmatpush.bf16.msra.mxu0 %v2978
  %5382 = vmatpush.bf16.msra.mxu0 %v2976
  %5383 = vmatpush.bf16.msra.mxu0 %v2974
  %5384 = vmatpush.bf16.msra.mxu0 %v2972
  %5385 = vmatpush.bf16.msra.mxu0 %v2970
  %5386 = vmatpush.bf16.msra.mxu0 %v2968
  %5387 = vmatpush.bf16.msra.mxu0 %v2966
  %5388 = vmatmul.bf16.gmra.mxu0 %v1115
  %v5389 = vpop.f32.mrf.mxu0
  %v5390 = vadd.f32 %v5347, %v5389
  %v5391 = vpop.f32.mrf.mxu0
  %v5392 = vadd.f32 %v5349, %v5391
  %5393 = vmatmul.bf16.gmra.mxu0 %v1140
  %v5394 = vpop.f32.mrf.mxu0
  %v5395 = vadd.f32 %v5352, %v5394
  %v5396 = vpop.f32.mrf.mxu0
  %v5397 = vadd.f32 %v5354, %v5396
  %5398 = vmatmul.bf16.gmra.mxu0 %v1165
  %v5399 = vpop.f32.mrf.mxu0
  %v5400 = vadd.f32 %v5357, %v5399
  %v5401 = vpop.f32.mrf.mxu0
  %v5402 = vadd.f32 %v5359, %v5401
  %5403 = vmatmul.bf16.gmra.mxu0 %v1190
  %v5404 = vpop.f32.mrf.mxu0
  %v5405 = vadd.f32 %v5362, %v5404
  %v5406 = vpop.f32.mrf.mxu0
  %v5407 = vadd.f32 %v5364, %v5406
  %5408 = vmatmul.bf16.gmra.mxu0 %v1215
  %v5409 = vpop.f32.mrf.mxu0
  %v5410 = vadd.f32 %v5367, %v5409
  %v5411 = vpop.f32.mrf.mxu0
  %v5412 = vadd.f32 %v5369, %v5411
  %5413 = vmatmul.bf16.gmra.mxu0 %v1240
  %v5414 = vpop.f32.mrf.mxu0
  %v5415 = vadd.f32 %v5372, %v5414
  %v5416 = vpop.f32.mrf.mxu0
  %v5417 = vadd.f32 %v5374, %v5416
  %5418 = vmatmul.bf16.gmra.mxu0 %v1265
  %v5419 = vpop.f32.mrf.mxu0
  %v5420 = vadd.f32 %v5377, %v5419
  %v5421 = vpop.f32.mrf.mxu0
  %5422 = vdwg.mxu0
  %5423 = vmatpush.bf16.msra.mxu0 %v2996
  %5424 = vmatpush.bf16.msra.mxu0 %v2994
  %5425 = vmatpush.bf16.msra.mxu0 %v2992
  %5426 = vmatpush.bf16.msra.mxu0 %v2990
  %5427 = vmatpush.bf16.msra.mxu0 %v2988
  %5428 = vmatpush.bf16.msra.mxu0 %v2986
  %5429 = vmatpush.bf16.msra.mxu0 %v2984
  %5430 = vmatpush.bf16.msra.mxu0 %v2982
  %5431 = vmatmul.bf16.gmra.mxu0 %v1116
  %v5432 = vpop.f32.mrf.mxu0
  %v5433 = vadd.f32 %v5390, %v5432
  %v5434 = vpop.f32.mrf.mxu0
  %v5435 = vadd.f32 %v5392, %v5434
  %5436 = vmatmul.bf16.gmra.mxu0 %v1141
  %v5437 = vpop.f32.mrf.mxu0
  %v5438 = vadd.f32 %v5395, %v5437
  %v5439 = vpop.f32.mrf.mxu0
  %v5440 = vadd.f32 %v5397, %v5439
  %5441 = vmatmul.bf16.gmra.mxu0 %v1166
  %v5442 = vpop.f32.mrf.mxu0
  %v5443 = vadd.f32 %v5400, %v5442
  %v5444 = vpop.f32.mrf.mxu0
  %v5445 = vadd.f32 %v5402, %v5444
  %5446 = vmatmul.bf16.gmra.mxu0 %v1191
  %v5447 = vpop.f32.mrf.mxu0
  %v5448 = vadd.f32 %v5405, %v5447
  %v5449 = vpop.f32.mrf.mxu0
  %v5450 = vadd.f32 %v5407, %v5449
  %5451 = vmatmul.bf16.gmra.mxu0 %v1216
  %v5452 = vpop.f32.mrf.mxu0
  %v5453 = vadd.f32 %v5410, %v5452
  %v5454 = vpop.f32.mrf.mxu0
  %v5455 = vadd.f32 %v5412, %v5454
  %5456 = vmatmul.bf16.gmra.mxu0 %v1241
  %v5457 = vpop.f32.mrf.mxu0
  %v5458 = vadd.f32 %v5415, %v5457
  %v5459 = vpop.f32.mrf.mxu0
  %v5460 = vadd.f32 %v5417, %v5459
  %5461 = vmatmul.bf16.gmra.mxu0 %v1266
  %v5462 = vpop.f32.mrf.mxu0
  %v5463 = vadd.f32 %v5420, %v5462
  %v5464 = vpop.f32.mrf.mxu0
  %5465 = vdwg.mxu0
  %5466 = vmatpush.bf16.msra.mxu0 %v3012
  %5467 = vmatpush.bf16.msra.mxu0 %v3010
  %5468 = vmatpush.bf16.msra.mxu0 %v3008
  %5469 = vmatpush.bf16.msra.mxu0 %v3006
  %5470 = vmatpush.bf16.msra.mxu0 %v3004
  %5471 = vmatpush.bf16.msra.mxu0 %v3002
  %5472 = vmatpush.bf16.msra.mxu0 %v3000
  %5473 = vmatpush.bf16.msra.mxu0 %v2998
  %5474 = vmatmul.bf16.gmra.mxu0 %v1117
  %v5475 = vpop.f32.mrf.mxu0
  %v5476 = vadd.f32 %v5433, %v5475
  %v5477 = vpop.f32.mrf.mxu0
  %v5478 = vadd.f32 %v5435, %v5477
  %5479 = vmatmul.bf16.gmra.mxu0 %v1142
  %v5480 = vpop.f32.mrf.mxu0
  %v5481 = vadd.f32 %v5438, %v5480
  %v5482 = vpop.f32.mrf.mxu0
  %v5483 = vadd.f32 %v5440, %v5482
  %5484 = vmatmul.bf16.gmra.mxu0 %v1167
  %v5485 = vpop.f32.mrf.mxu0
  %v5486 = vadd.f32 %v5443, %v5485
  %v5487 = vpop.f32.mrf.mxu0
  %v5488 = vadd.f32 %v5445, %v5487
  %5489 = vmatmul.bf16.gmra.mxu0 %v1192
  %v5490 = vpop.f32.mrf.mxu0
  %v5491 = vadd.f32 %v5448, %v5490
  %v5492 = vpop.f32.mrf.mxu0
  %v5493 = vadd.f32 %v5450, %v5492
  %5494 = vmatmul.bf16.gmra.mxu0 %v1217
  %v5495 = vpop.f32.mrf.mxu0
  %v5496 = vadd.f32 %v5453, %v5495
  %v5497 = vpop.f32.mrf.mxu0
  %v5498 = vadd.f32 %v5455, %v5497
  %5499 = vmatmul.bf16.gmra.mxu0 %v1242
  %v5500 = vpop.f32.mrf.mxu0
  %v5501 = vadd.f32 %v5458, %v5500
  %v5502 = vpop.f32.mrf.mxu0
  %v5503 = vadd.f32 %v5460, %v5502
  %5504 = vmatmul.bf16.gmra.mxu0 %v1267
  %v5505 = vpop.f32.mrf.mxu0
  %v5506 = vadd.f32 %v5463, %v5505
  %v5507 = vpop.f32.mrf.mxu0
  %5508 = vdwg.mxu0
  %5509 = vmatpush.bf16.msra.mxu0 %v3028
  %5510 = vmatpush.bf16.msra.mxu0 %v3026
  %5511 = vmatpush.bf16.msra.mxu0 %v3024
  %5512 = vmatpush.bf16.msra.mxu0 %v3022
  %5513 = vmatpush.bf16.msra.mxu0 %v3020
  %5514 = vmatpush.bf16.msra.mxu0 %v3018
  %5515 = vmatpush.bf16.msra.mxu0 %v3016
  %5516 = vmatpush.bf16.msra.mxu0 %v3014
  %5517 = vmatmul.bf16.gmra.mxu0 %v1118
  %v5518 = vpop.f32.mrf.mxu0
  %v5519 = vadd.f32 %v5476, %v5518
  %v5520 = vpop.f32.mrf.mxu0
  %v5521 = vadd.f32 %v5478, %v5520
  %5522 = vmatmul.bf16.gmra.mxu0 %v1143
  %v5523 = vpop.f32.mrf.mxu0
  %v5524 = vadd.f32 %v5481, %v5523
  %v5525 = vpop.f32.mrf.mxu0
  %v5526 = vadd.f32 %v5483, %v5525
  %5527 = vmatmul.bf16.gmra.mxu0 %v1168
  %v5528 = vpop.f32.mrf.mxu0
  %v5529 = vadd.f32 %v5486, %v5528
  %v5530 = vpop.f32.mrf.mxu0
  %v5531 = vadd.f32 %v5488, %v5530
  %5532 = vmatmul.bf16.gmra.mxu0 %v1193
  %v5533 = vpop.f32.mrf.mxu0
  %v5534 = vadd.f32 %v5491, %v5533
  %v5535 = vpop.f32.mrf.mxu0
  %v5536 = vadd.f32 %v5493, %v5535
  %5537 = vmatmul.bf16.gmra.mxu0 %v1218
  %v5538 = vpop.f32.mrf.mxu0
  %v5539 = vadd.f32 %v5496, %v5538
  %v5540 = vpop.f32.mrf.mxu0
  %v5541 = vadd.f32 %v5498, %v5540
  %5542 = vmatmul.bf16.gmra.mxu0 %v1243
  %v5543 = vpop.f32.mrf.mxu0
  %v5544 = vadd.f32 %v5501, %v5543
  %v5545 = vpop.f32.mrf.mxu0
  %v5546 = vadd.f32 %v5503, %v5545
  %5547 = vmatmul.bf16.gmra.mxu0 %v1268
  %v5548 = vpop.f32.mrf.mxu0
  %v5549 = vadd.f32 %v5506, %v5548
  %v5550 = vpop.f32.mrf.mxu0
  %5551 = vdwg.mxu0
  %5552 = vmatpush.bf16.msra.mxu0 %v3044
  %5553 = vmatpush.bf16.msra.mxu0 %v3042
  %5554 = vmatpush.bf16.msra.mxu0 %v3040
  %5555 = vmatpush.bf16.msra.mxu0 %v3038
  %5556 = vmatpush.bf16.msra.mxu0 %v3036
  %5557 = vmatpush.bf16.msra.mxu0 %v3034
  %5558 = vmatpush.bf16.msra.mxu0 %v3032
  %5559 = vmatpush.bf16.msra.mxu0 %v3030
  %5560 = vmatmul.bf16.gmra.mxu0 %v1119
  %v5561 = vpop.f32.mrf.mxu0
  %v5562 = vadd.f32 %v5519, %v5561
  %v5563 = vpop.f32.mrf.mxu0
  %v5564 = vadd.f32 %v5521, %v5563
  %5565 = vmatmul.bf16.gmra.mxu0 %v1144
  %v5566 = vpop.f32.mrf.mxu0
  %v5567 = vadd.f32 %v5524, %v5566
  %v5568 = vpop.f32.mrf.mxu0
  %v5569 = vadd.f32 %v5526, %v5568
  %5570 = vmatmul.bf16.gmra.mxu0 %v1169
  %v5571 = vpop.f32.mrf.mxu0
  %v5572 = vadd.f32 %v5529, %v5571
  %v5573 = vpop.f32.mrf.mxu0
  %v5574 = vadd.f32 %v5531, %v5573
  %5575 = vmatmul.bf16.gmra.mxu0 %v1194
  %v5576 = vpop.f32.mrf.mxu0
  %v5577 = vadd.f32 %v5534, %v5576
  %v5578 = vpop.f32.mrf.mxu0
  %v5579 = vadd.f32 %v5536, %v5578
  %5580 = vmatmul.bf16.gmra.mxu0 %v1219
  %v5581 = vpop.f32.mrf.mxu0
  %v5582 = vadd.f32 %v5539, %v5581
  %v5583 = vpop.f32.mrf.mxu0
  %v5584 = vadd.f32 %v5541, %v5583
  %5585 = vmatmul.bf16.gmra.mxu0 %v1244
  %v5586 = vpop.f32.mrf.mxu0
  %v5587 = vadd.f32 %v5544, %v5586
  %v5588 = vpop.f32.mrf.mxu0
  %v5589 = vadd.f32 %v5546, %v5588
  %5590 = vmatmul.bf16.gmra.mxu0 %v1269
  %v5591 = vpop.f32.mrf.mxu0
  %v5592 = vadd.f32 %v5549, %v5591
  %v5593 = vpop.f32.mrf.mxu0
  %5594 = vdwg.mxu0
  %v5595 = vmax.f32 %v4487, 0.0
  %v5596 = vmax.f32 %v5562, 0.0
  %v5597 = vmax.f32 %v4489, 0.0
  %v5598 = vmax.f32 %v5564, 0.0
  %v5599 = vmax.f32 %v4492, 0.0
  %v5600 = vmax.f32 %v5567, 0.0
  %v5601 = vmax.f32 %v4494, 0.0
  %v5602 = vmax.f32 %v5569, 0.0
  %v5603 = vmax.f32 %v4497, 0.0
  %v5604 = vmax.f32 %v5572, 0.0
  %v5605 = vmax.f32 %v4499, 0.0
  %v5606 = vmax.f32 %v5574, 0.0
  %v5607 = vmax.f32 %v4502, 0.0
  %v5608 = vmax.f32 %v5577, 0.0
  %v5609 = vmax.f32 %v4504, 0.0
  %v5610 = vmax.f32 %v5579, 0.0
  %v5611 = vmax.f32 %v4507, 0.0
  %v5612 = vmax.f32 %v5582, 0.0
  %v5613 = vmax.f32 %v4509, 0.0
  %v5614 = vmax.f32 %v5584, 0.0
  %v5615 = vmax.f32 %v4512, 0.0
  %v5616 = vmax.f32 %v5587, 0.0
  %v5617 = vmax.f32 %v4514, 0.0
  %v5618 = vmax.f32 %v5589, 0.0
  %v5619 = vmax.f32 %v4517, 0.0
  %v5620 = vmax.f32 %v5592, 0.0
  %v5621 = vpack.c.bf16 %v5597, %v5595
  %v5622 = vpack.c.bf16 %v5598, %v5596
  %v5623 = vpack.c.bf16 %v5601, %v5599
  %v5624 = vpack.c.bf16 %v5602, %v5600
  %v5625 = vpack.c.bf16 %v5605, %v5603
  %v5626 = vpack.c.bf16 %v5606, %v5604
  %v5627 = vpack.c.bf16 %v5609, %v5607
  %v5628 = vpack.c.bf16 %v5610, %v5608
  %v5629 = vpack.c.bf16 %v5613, %v5611
  %v5630 = vpack.c.bf16 %v5614, %v5612
  %v5631 = vpack.c.bf16 %v5617, %v5615
  %v5632 = vpack.c.bf16 %v5618, %v5616
  %v5633 = vpack.c.bf16 %v5619, %v5619
  %v5634 = vpack.c.bf16 %v5620, %v5620
  %v5635 = vld [vmem:[%s3] sm:$0xff]
  %v5636 = vld [vmem:[%s3 + $0x8] sm:$0xff]
  %v5637 = vld [vmem:[%s3 + $0x10] sm:$0xff]
  %v5638 = vld [vmem:[%s3 + $0x18] sm:$0xff]
  %v5639 = vld [vmem:[%s3 + $0x20] sm:$0xff]
  %v5640 = vld [vmem:[%s3 + $0x28] sm:$0xff]
  %v5641 = vld [vmem:[%s3 + $0x30] sm:$0xff]
  %v5642 = vld [vmem:[%s3 + $0x38] sm:$0xff]
  %v5643 = vld [vmem:[%s3 + $0x40] sm:$0xff]
  %v5644 = vld [vmem:[%s3 + $0x48] sm:$0xff]
  %v5645 = vld [vmem:[%s3 + $0x50] sm:$0xff]
  %v5646 = vld [vmem:[%s3 + $0x58] sm:$0xff]
  %v5647 = vld [vmem:[%s3 + $0x60] sm:$0xff]
  %v5648 = vld [vmem:[%s3 + $0x68] sm:$0xff]
  %v5649 = vld [vmem:[%s3 + $0x70] sm:$0xff]
  %v5650 = vld [vmem:[%s3 + $0x78] sm:$0xff]
  %v5651 = vld [vmem:[%s3 + $0x80] sm:$0xff]
  %v5652 = vld [vmem:[%s3 + $0x88] sm:$0xff]
  %v5653 = vld [vmem:[%s3 + $0x90] sm:$0xff]
  %v5654 = vld [vmem:[%s3 + $0x98] sm:$0xff]
  %v5655 = vld [vmem:[%s3 + $0xa0] sm:$0xff]
  %v5656 = vld [vmem:[%s3 + $0xa8] sm:$0xff]
  %v5657 = vld [vmem:[%s3 + $0xb0] sm:$0xff]
  %v5658 = vld [vmem:[%s3 + $0xb8] sm:$0xff]
  %v5659 = vld [vmem:[%s3 + $0xc0] sm:$0xff]
  %v5660 = vld [vmem:[%s3 + $0xc8] sm:$0xff]
  %v5661 = vld [vmem:[%s3 + $0xd0] sm:$0xff]
  %v5662 = vld [vmem:[%s3 + $0xd8] sm:$0xff]
  %v5663 = vld [vmem:[%s3 + $0xe0] sm:$0xff]
  %v5664 = vld [vmem:[%s3 + $0xe8] sm:$0xff]
  %v5665 = vld [vmem:[%s3 + $0xf0] sm:$0xff]
  %v5666 = vld [vmem:[%s3 + $0xf8] sm:$0xff]
  %v5667 = vld [vmem:[%s4] sm:$0x3]
  %v5669 = vperm.slane %v5667, 0
  %v5670 = vperm.slane %v5667, 1
  %v5705 = vunpack.c.l.b16 %v5635
  %v5706 = vunpack.c.h.b16 %v5635
  %v5707 = vunpack.c.l.b16 %v5636
  %v5708 = vunpack.c.h.b16 %v5636
  %v5709 = vunpack.c.l.b16 %v5637
  %v5710 = vunpack.c.h.b16 %v5637
  %v5711 = vunpack.c.l.b16 %v5638
  %v5712 = vunpack.c.h.b16 %v5638
  %v5713 = vunpack.c.l.b16 %v5639
  %v5714 = vunpack.c.h.b16 %v5639
  %v5715 = vunpack.c.l.b16 %v5640
  %v5716 = vunpack.c.h.b16 %v5640
  %v5717 = vunpack.c.l.b16 %v5641
  %v5718 = vunpack.c.h.b16 %v5641
  %v5719 = vunpack.c.l.b16 %v5642
  %v5720 = vunpack.c.h.b16 %v5642
  %v5721 = vunpack.c.l.b16 %v5643
  %v5722 = vunpack.c.h.b16 %v5643
  %v5723 = vunpack.c.l.b16 %v5644
  %v5724 = vunpack.c.h.b16 %v5644
  %v5725 = vunpack.c.l.b16 %v5645
  %v5726 = vunpack.c.h.b16 %v5645
  %v5727 = vunpack.c.l.b16 %v5646
  %v5728 = vunpack.c.h.b16 %v5646
  %v5729 = vunpack.c.l.b16 %v5647
  %v5730 = vunpack.c.h.b16 %v5647
  %v5731 = vunpack.c.l.b16 %v5648
  %v5732 = vunpack.c.h.b16 %v5648
  %v5733 = vunpack.c.l.b16 %v5649
  %v5734 = vunpack.c.h.b16 %v5649
  %v5735 = vunpack.c.l.b16 %v5650
  %v5736 = vunpack.c.h.b16 %v5650
  %v5737 = vunpack.c.l.b16 %v5651
  %v5738 = vunpack.c.h.b16 %v5651
  %v5739 = vunpack.c.l.b16 %v5652
  %v5740 = vunpack.c.h.b16 %v5652
  %v5741 = vunpack.c.l.b16 %v5653
  %v5742 = vunpack.c.h.b16 %v5653
  %v5743 = vunpack.c.l.b16 %v5654
  %v5744 = vunpack.c.h.b16 %v5654
  %v5745 = vunpack.c.l.b16 %v5655
  %v5746 = vunpack.c.h.b16 %v5655
  %v5747 = vunpack.c.l.b16 %v5656
  %v5748 = vunpack.c.h.b16 %v5656
  %v5749 = vunpack.c.l.b16 %v5657
  %v5750 = vunpack.c.h.b16 %v5657
  %v5751 = vunpack.c.l.b16 %v5658
  %v5752 = vunpack.c.h.b16 %v5658
  %v5753 = vunpack.c.l.b16 %v5659
  %v5754 = vunpack.c.h.b16 %v5659
  %v5755 = vunpack.c.l.b16 %v5660
  %v5756 = vunpack.c.h.b16 %v5660
  %v5757 = vunpack.c.l.b16 %v5661
  %v5758 = vunpack.c.h.b16 %v5661
  %v5759 = vunpack.c.l.b16 %v5662
  %v5760 = vunpack.c.h.b16 %v5662
  %v5761 = vunpack.c.l.b16 %v5663
  %v5762 = vunpack.c.h.b16 %v5663
  %v5763 = vunpack.c.l.b16 %v5664
  %v5764 = vunpack.c.h.b16 %v5664
  %v5765 = vunpack.c.l.b16 %v5665
  %v5766 = vunpack.c.h.b16 %v5665
  %v5767 = vunpack.c.l.b16 %v5666
  %v5768 = vunpack.c.h.b16 %v5666
  %v5769 = vpack.c.b16 %v5707, %v5705
  %v5770 = vpack.c.b16 %v5708, %v5706
  %v5771 = vpack.c.b16 %v5711, %v5709
  %v5772 = vpack.c.b16 %v5712, %v5710
  %v5773 = vpack.c.b16 %v5715, %v5713
  %v5774 = vpack.c.b16 %v5716, %v5714
  %v5775 = vpack.c.b16 %v5719, %v5717
  %v5776 = vpack.c.b16 %v5720, %v5718
  %v5777 = vpack.c.b16 %v5723, %v5721
  %v5778 = vpack.c.b16 %v5724, %v5722
  %v5779 = vpack.c.b16 %v5727, %v5725
  %v5780 = vpack.c.b16 %v5728, %v5726
  %v5781 = vpack.c.b16 %v5731, %v5729
  %v5782 = vpack.c.b16 %v5732, %v5730
  %v5783 = vpack.c.b16 %v5735, %v5733
  %v5784 = vpack.c.b16 %v5736, %v5734
  %v5785 = vpack.c.b16 %v5739, %v5737
  %v5786 = vpack.c.b16 %v5740, %v5738
  %v5787 = vpack.c.b16 %v5743, %v5741
  %v5788 = vpack.c.b16 %v5744, %v5742
  %v5789 = vpack.c.b16 %v5747, %v5745
  %v5790 = vpack.c.b16 %v5748, %v5746
  %v5791 = vpack.c.b16 %v5751, %v5749
  %v5792 = vpack.c.b16 %v5752, %v5750
  %v5793 = vpack.c.b16 %v5755, %v5753
  %v5794 = vpack.c.b16 %v5756, %v5754
  %v5795 = vpack.c.b16 %v5759, %v5757
  %v5796 = vpack.c.b16 %v5760, %v5758
  %v5797 = vpack.c.b16 %v5763, %v5761
  %v5798 = vpack.c.b16 %v5764, %v5762
  %v5799 = vpack.c.b16 %v5767, %v5765
  %v5800 = vpack.c.b16 %v5768, %v5766
  %5833 = vmatpush.bf16.msra.mxu0 %v5783
  %5834 = vmatpush.bf16.msra.mxu0 %v5781
  %5835 = vmatpush.bf16.msra.mxu0 %v5779
  %5836 = vmatpush.bf16.msra.mxu0 %v5777
  %5837 = vmatpush.bf16.msra.mxu0 %v5775
  %5838 = vmatpush.bf16.msra.mxu0 %v5773
  %5839 = vmatpush.bf16.msra.mxu0 %v5771
  %5840 = vmatpush.bf16.msra.mxu0 %v5769
  %5841 = vmatmul.bf16.gmra.mxu0 %v5621
  %v5842 = vpop.f32.mrf.mxu0
  %v5843 = vadd.f32 %v5669, %v5842
  %v5844 = vpop.f32.mrf.mxu0
  %v5845 = vadd.f32 %v5669, %v5844
  %5846 = vmatmul.bf16.gmra.mxu0 %v5623
  %v5847 = vpop.f32.mrf.mxu0
  %v5848 = vadd.f32 %v5669, %v5847
  %v5849 = vpop.f32.mrf.mxu0
  %v5850 = vadd.f32 %v5669, %v5849
  %5851 = vmatmul.bf16.gmra.mxu0 %v5625
  %v5852 = vpop.f32.mrf.mxu0
  %v5853 = vadd.f32 %v5669, %v5852
  %v5854 = vpop.f32.mrf.mxu0
  %v5855 = vadd.f32 %v5669, %v5854
  %5856 = vmatmul.bf16.gmra.mxu0 %v5627
  %v5857 = vpop.f32.mrf.mxu0
  %v5858 = vadd.f32 %v5669, %v5857
  %v5859 = vpop.f32.mrf.mxu0
  %v5860 = vadd.f32 %v5669, %v5859
  %5861 = vmatmul.bf16.gmra.mxu0 %v5629
  %v5862 = vpop.f32.mrf.mxu0
  %v5863 = vadd.f32 %v5669, %v5862
  %v5864 = vpop.f32.mrf.mxu0
  %v5865 = vadd.f32 %v5669, %v5864
  %5866 = vmatmul.bf16.gmra.mxu0 %v5631
  %v5867 = vpop.f32.mrf.mxu0
  %v5868 = vadd.f32 %v5669, %v5867
  %v5869 = vpop.f32.mrf.mxu0
  %v5870 = vadd.f32 %v5669, %v5869
  %5871 = vmatmul.bf16.gmra.mxu0 %v5633
  %v5872 = vpop.f32.mrf.mxu0
  %v5873 = vadd.f32 %v5669, %v5872
  %v5874 = vpop.f32.mrf.mxu0
  %5875 = vdwg.mxu0
  %5876 = vmatpush.bf16.msra.mxu0 %v5799
  %5877 = vmatpush.bf16.msra.mxu0 %v5797
  %5878 = vmatpush.bf16.msra.mxu0 %v5795
  %5879 = vmatpush.bf16.msra.mxu0 %v5793
  %5880 = vmatpush.bf16.msra.mxu0 %v5791
  %5881 = vmatpush.bf16.msra.mxu0 %v5789
  %5882 = vmatpush.bf16.msra.mxu0 %v5787
  %5883 = vmatpush.bf16.msra.mxu0 %v5785
  %5884 = vmatmul.bf16.gmra.mxu0 %v5622
  %v5885 = vpop.f32.mrf.mxu0
  %v5886 = vadd.f32 %v5843, %v5885
  %v5887 = vpop.f32.mrf.mxu0
  %v5888 = vadd.f32 %v5845, %v5887
  %5889 = vmatmul.bf16.gmra.mxu0 %v5624
  %v5890 = vpop.f32.mrf.mxu0
  %v5891 = vadd.f32 %v5848, %v5890
  %v5892 = vpop.f32.mrf.mxu0
  %v5893 = vadd.f32 %v5850, %v5892
  %5894 = vmatmul.bf16.gmra.mxu0 %v5626
  %v5895 = vpop.f32.mrf.mxu0
  %v5896 = vadd.f32 %v5853, %v5895
  %v5897 = vpop.f32.mrf.mxu0
  %v5898 = vadd.f32 %v5855, %v5897
  %5899 = vmatmul.bf16.gmra.mxu0 %v5628
  %v5900 = vpop.f32.mrf.mxu0
  %v5901 = vadd.f32 %v5858, %v5900
  %v5902 = vpop.f32.mrf.mxu0
  %v5903 = vadd.f32 %v5860, %v5902
  %5904 = vmatmul.bf16.gmra.mxu0 %v5630
  %v5905 = vpop.f32.mrf.mxu0
  %v5906 = vadd.f32 %v5863, %v5905
  %v5907 = vpop.f32.mrf.mxu0
  %v5908 = vadd.f32 %v5865, %v5907
  %5909 = vmatmul.bf16.gmra.mxu0 %v5632
  %v5910 = vpop.f32.mrf.mxu0
  %v5911 = vadd.f32 %v5868, %v5910
  %v5912 = vpop.f32.mrf.mxu0
  %v5913 = vadd.f32 %v5870, %v5912
  %5914 = vmatmul.bf16.gmra.mxu0 %v5634
  %v5915 = vpop.f32.mrf.mxu0
  %v5916 = vadd.f32 %v5873, %v5915
  %v5917 = vpop.f32.mrf.mxu0
  %5918 = vdwg.mxu0
  %5919 = vmatpush.bf16.msra.mxu0 %v5784
  %5920 = vmatpush.bf16.msra.mxu0 %v5782
  %5921 = vmatpush.bf16.msra.mxu0 %v5780
  %5922 = vmatpush.bf16.msra.mxu0 %v5778
  %5923 = vmatpush.bf16.msra.mxu0 %v5776
  %5924 = vmatpush.bf16.msra.mxu0 %v5774
  %5925 = vmatpush.bf16.msra.mxu0 %v5772
  %5926 = vmatpush.bf16.msra.mxu0 %v5770
  %5927 = vmatmul.bf16.gmra.mxu0 %v5621
  %v5928 = vpop.f32.mrf.mxu0
  %v5929 = vadd.f32 %v5670, %v5928
  %v5930 = vpop.f32.mrf.mxu0
  %v5931 = vadd.f32 %v5670, %v5930
  %5932 = vmatmul.bf16.gmra.mxu0 %v5623
  %v5933 = vpop.f32.mrf.mxu0
  %v5934 = vadd.f32 %v5670, %v5933
  %v5935 = vpop.f32.mrf.mxu0
  %v5936 = vadd.f32 %v5670, %v5935
  %5937 = vmatmul.bf16.gmra.mxu0 %v5625
  %v5938 = vpop.f32.mrf.mxu0
  %v5939 = vadd.f32 %v5670, %v5938
  %v5940 = vpop.f32.mrf.mxu0
  %v5941 = vadd.f32 %v5670, %v5940
  %5942 = vmatmul.bf16.gmra.mxu0 %v5627
  %v5943 = vpop.f32.mrf.mxu0
  %v5944 = vadd.f32 %v5670, %v5943
  %v5945 = vpop.f32.mrf.mxu0
  %v5946 = vadd.f32 %v5670, %v5945
  %5947 = vmatmul.bf16.gmra.mxu0 %v5629
  %v5948 = vpop.f32.mrf.mxu0
  %v5949 = vadd.f32 %v5670, %v5948
  %v5950 = vpop.f32.mrf.mxu0
  %v5951 = vadd.f32 %v5670, %v5950
  %5952 = vmatmul.bf16.gmra.mxu0 %v5631
  %v5953 = vpop.f32.mrf.mxu0
  %v5954 = vadd.f32 %v5670, %v5953
  %v5955 = vpop.f32.mrf.mxu0
  %v5956 = vadd.f32 %v5670, %v5955
  %5957 = vmatmul.bf16.gmra.mxu0 %v5633
  %v5958 = vpop.f32.mrf.mxu0
  %v5959 = vadd.f32 %v5670, %v5958
  %v5960 = vpop.f32.mrf.mxu0
  %5961 = vdwg.mxu0
  %5962 = vmatpush.bf16.msra.mxu0 %v5800
  %5963 = vmatpush.bf16.msra.mxu0 %v5798
  %5964 = vmatpush.bf16.msra.mxu0 %v5796
  %5965 = vmatpush.bf16.msra.mxu0 %v5794
  %5966 = vmatpush.bf16.msra.mxu0 %v5792
  %5967 = vmatpush.bf16.msra.mxu0 %v5790
  %5968 = vmatpush.bf16.msra.mxu0 %v5788
  %5969 = vmatpush.bf16.msra.mxu0 %v5786
  %5970 = vmatmul.bf16.gmra.mxu0 %v5622
  %v5971 = vpop.f32.mrf.mxu0
  %v5972 = vadd.f32 %v5929, %v5971
  %v5973 = vpop.f32.mrf.mxu0
  %v5974 = vadd.f32 %v5931, %v5973
  %5975 = vmatmul.bf16.gmra.mxu0 %v5624
  %v5976 = vpop.f32.mrf.mxu0
  %v5977 = vadd.f32 %v5934, %v5976
  %v5978 = vpop.f32.mrf.mxu0
  %v5979 = vadd.f32 %v5936, %v5978
  %5980 = vmatmul.bf16.gmra.mxu0 %v5626
  %v5981 = vpop.f32.mrf.mxu0
  %v5982 = vadd.f32 %v5939, %v5981
  %v5983 = vpop.f32.mrf.mxu0
  %v5984 = vadd.f32 %v5941, %v5983
  %5985 = vmatmul.bf16.gmra.mxu0 %v5628
  %v5986 = vpop.f32.mrf.mxu0
  %v5987 = vadd.f32 %v5944, %v5986
  %v5988 = vpop.f32.mrf.mxu0
  %v5989 = vadd.f32 %v5946, %v5988
  %5990 = vmatmul.bf16.gmra.mxu0 %v5630
  %v5991 = vpop.f32.mrf.mxu0
  %v5992 = vadd.f32 %v5949, %v5991
  %v5993 = vpop.f32.mrf.mxu0
  %v5994 = vadd.f32 %v5951, %v5993
  %5995 = vmatmul.bf16.gmra.mxu0 %v5632
  %v5996 = vpop.f32.mrf.mxu0
  %v5997 = vadd.f32 %v5954, %v5996
  %v5998 = vpop.f32.mrf.mxu0
  %v5999 = vadd.f32 %v5956, %v5998
  %6000 = vmatmul.bf16.gmra.mxu0 %v5634
  %v6001 = vpop.f32.mrf.mxu0
  %v6002 = vadd.f32 %v5959, %v6001
  %v6003 = vpop.f32.mrf.mxu0
  %6004 = vdwg.mxu0
  %v6005 = vmax.f32 %v5886, 0.0
  %v6006 = vmax.f32 %v5972, 0.0
  %v6007 = vmax.f32 %v5888, 0.0
  %v6008 = vmax.f32 %v5974, 0.0
  %v6009 = vmax.f32 %v5891, 0.0
  %v6010 = vmax.f32 %v5977, 0.0
  %v6011 = vmax.f32 %v5893, 0.0
  %v6012 = vmax.f32 %v5979, 0.0
  %v6013 = vmax.f32 %v5896, 0.0
  %v6014 = vmax.f32 %v5982, 0.0
  %v6015 = vmax.f32 %v5898, 0.0
  %v6016 = vmax.f32 %v5984, 0.0
  %v6017 = vmax.f32 %v5901, 0.0
  %v6018 = vmax.f32 %v5987, 0.0
  %v6019 = vmax.f32 %v5903, 0.0
  %v6020 = vmax.f32 %v5989, 0.0
  %v6021 = vmax.f32 %v5906, 0.0
  %v6022 = vmax.f32 %v5992, 0.0
  %v6023 = vmax.f32 %v5908, 0.0
  %v6024 = vmax.f32 %v5994, 0.0
  %v6025 = vmax.f32 %v5911, 0.0
  %v6026 = vmax.f32 %v5997, 0.0
  %v6027 = vmax.f32 %v5913, 0.0
  %v6028 = vmax.f32 %v5999, 0.0
  %v6029 = vmax.f32 %v5916, 0.0
  %v6030 = vmax.f32 %v6002, 0.0
  %v6031 = vpack.c.bf16 %v6007, %v6005
  %v6032 = vpack.c.bf16 %v6008, %v6006
  %v6033 = vpack.c.bf16 %v6011, %v6009
  %v6034 = vpack.c.bf16 %v6012, %v6010
  %v6035 = vpack.c.bf16 %v6015, %v6013
  %v6036 = vpack.c.bf16 %v6016, %v6014
  %v6037 = vpack.c.bf16 %v6019, %v6017
  %v6038 = vpack.c.bf16 %v6020, %v6018
  %v6039 = vpack.c.bf16 %v6023, %v6021
  %v6040 = vpack.c.bf16 %v6024, %v6022
  %v6041 = vpack.c.bf16 %v6027, %v6025
  %v6042 = vpack.c.bf16 %v6028, %v6026
  %v6043 = vpack.c.bf16 %v6029, %v6029
  %v6044 = vpack.c.bf16 %v6030, %v6030
  %v6045 = vld [vmem:[%s5] sm:$0xff]
  %v6046 = vld [vmem:[%s5 + $0x8] sm:$0xff]
  %v6047 = vld [vmem:[%s5 + $0x10] sm:$0xff]
  %v6048 = vld [vmem:[%s5 + $0x18] sm:$0xff]
  %v6049 = vld [vmem:[%s5 + $0x20] sm:$0xff]
  %v6050 = vld [vmem:[%s5 + $0x28] sm:$0xff]
  %v6051 = vld [vmem:[%s5 + $0x30] sm:$0xff]
  %v6052 = vld [vmem:[%s5 + $0x38] sm:$0xff]
  %v6053 = vld [vmem:[%s5 + $0x40] sm:$0xff]
  %v6054 = vld [vmem:[%s5 + $0x48] sm:$0xff]
  %v6055 = vld [vmem:[%s5 + $0x50] sm:$0xff]
  %v6056 = vld [vmem:[%s5 + $0x58] sm:$0xff]
  %v6057 = vld [vmem:[%s5 + $0x60] sm:$0xff]
  %v6058 = vld [vmem:[%s5 + $0x68] sm:$0xff]
  %v6059 = vld [vmem:[%s5 + $0x70] sm:$0xff]
  %v6060 = vld [vmem:[%s5 + $0x78] sm:$0xff]
  %v6061 = vld [vmem:[%s5 + $0x80] sm:$0xff]
  %v6062 = vld [vmem:[%s5 + $0x88] sm:$0xff]
  %v6063 = vld [vmem:[%s5 + $0x90] sm:$0xff]
  %v6064 = vld [vmem:[%s5 + $0x98] sm:$0xff]
  %v6065 = vld [vmem:[%s5 + $0xa0] sm:$0xff]
  %v6066 = vld [vmem:[%s5 + $0xa8] sm:$0xff]
  %v6067 = vld [vmem:[%s5 + $0xb0] sm:$0xff]
  %v6068 = vld [vmem:[%s5 + $0xb8] sm:$0xff]
  %v6069 = vld [vmem:[%s5 + $0xc0] sm:$0xff]
  %v6070 = vld [vmem:[%s5 + $0xc8] sm:$0xff]
  %v6071 = vld [vmem:[%s5 + $0xd0] sm:$0xff]
  %v6072 = vld [vmem:[%s5 + $0xd8] sm:$0xff]
  %v6073 = vld [vmem:[%s5 + $0xe0] sm:$0xff]
  %v6074 = vld [vmem:[%s5 + $0xe8] sm:$0xff]
  %v6075 = vld [vmem:[%s5 + $0xf0] sm:$0xff]
  %v6076 = vld [vmem:[%s5 + $0xf8] sm:$0xff]
  %v6077 = vld [vmem:[%s6] sm:$0x3]
  %v6079 = vperm.slane %v6077, 0
  %v6080 = vperm.slane %v6077, 1
  %v6115 = vunpack.c.l.b16 %v6045
  %v6116 = vunpack.c.h.b16 %v6045
  %v6117 = vunpack.c.l.b16 %v6046
  %v6118 = vunpack.c.h.b16 %v6046
  %v6119 = vunpack.c.l.b16 %v6047
  %v6120 = vunpack.c.h.b16 %v6047
  %v6121 = vunpack.c.l.b16 %v6048
  %v6122 = vunpack.c.h.b16 %v6048
  %v6123 = vunpack.c.l.b16 %v6049
  %v6124 = vunpack.c.h.b16 %v6049
  %v6125 = vunpack.c.l.b16 %v6050
  %v6126 = vunpack.c.h.b16 %v6050
  %v6127 = vunpack.c.l.b16 %v6051
  %v6128 = vunpack.c.h.b16 %v6051
  %v6129 = vunpack.c.l.b16 %v6052
  %v6130 = vunpack.c.h.b16 %v6052
  %v6131 = vunpack.c.l.b16 %v6053
  %v6132 = vunpack.c.h.b16 %v6053
  %v6133 = vunpack.c.l.b16 %v6054
  %v6134 = vunpack.c.h.b16 %v6054
  %v6135 = vunpack.c.l.b16 %v6055
  %v6136 = vunpack.c.h.b16 %v6055
  %v6137 = vunpack.c.l.b16 %v6056
  %v6138 = vunpack.c.h.b16 %v6056
  %v6139 = vunpack.c.l.b16 %v6057
  %v6140 = vunpack.c.h.b16 %v6057
  %v6141 = vunpack.c.l.b16 %v6058
  %v6142 = vunpack.c.h.b16 %v6058
  %v6143 = vunpack.c.l.b16 %v6059
  %v6144 = vunpack.c.h.b16 %v6059
  %v6145 = vunpack.c.l.b16 %v6060
  %v6146 = vunpack.c.h.b16 %v6060
  %v6147 = vunpack.c.l.b16 %v6061
  %v6148 = vunpack.c.h.b16 %v6061
  %v6149 = vunpack.c.l.b16 %v6062
  %v6150 = vunpack.c.h.b16 %v6062
  %v6151 = vunpack.c.l.b16 %v6063
  %v6152 = vunpack.c.h.b16 %v6063
  %v6153 = vunpack.c.l.b16 %v6064
  %v6154 = vunpack.c.h.b16 %v6064
  %v6155 = vunpack.c.l.b16 %v6065
  %v6156 = vunpack.c.h.b16 %v6065
  %v6157 = vunpack.c.l.b16 %v6066
  %v6158 = vunpack.c.h.b16 %v6066
  %v6159 = vunpack.c.l.b16 %v6067
  %v6160 = vunpack.c.h.b16 %v6067
  %v6161 = vunpack.c.l.b16 %v6068
  %v6162 = vunpack.c.h.b16 %v6068
  %v6163 = vunpack.c.l.b16 %v6069
  %v6164 = vunpack.c.h.b16 %v6069
  %v6165 = vunpack.c.l.b16 %v6070
  %v6166 = vunpack.c.h.b16 %v6070
  %v6167 = vunpack.c.l.b16 %v6071
  %v6168 = vunpack.c.h.b16 %v6071
  %v6169 = vunpack.c.l.b16 %v6072
  %v6170 = vunpack.c.h.b16 %v6072
  %v6171 = vunpack.c.l.b16 %v6073
  %v6172 = vunpack.c.h.b16 %v6073
  %v6173 = vunpack.c.l.b16 %v6074
  %v6174 = vunpack.c.h.b16 %v6074
  %v6175 = vunpack.c.l.b16 %v6075
  %v6176 = vunpack.c.h.b16 %v6075
  %v6177 = vunpack.c.l.b16 %v6076
  %v6178 = vunpack.c.h.b16 %v6076
  %v6179 = vpack.c.b16 %v6117, %v6115
  %v6180 = vpack.c.b16 %v6118, %v6116
  %v6181 = vpack.c.b16 %v6121, %v6119
  %v6182 = vpack.c.b16 %v6122, %v6120
  %v6183 = vpack.c.b16 %v6125, %v6123
  %v6184 = vpack.c.b16 %v6126, %v6124
  %v6185 = vpack.c.b16 %v6129, %v6127
  %v6186 = vpack.c.b16 %v6130, %v6128
  %v6187 = vpack.c.b16 %v6133, %v6131
  %v6188 = vpack.c.b16 %v6134, %v6132
  %v6189 = vpack.c.b16 %v6137, %v6135
  %v6190 = vpack.c.b16 %v6138, %v6136
  %v6191 = vpack.c.b16 %v6141, %v6139
  %v6192 = vpack.c.b16 %v6142, %v6140
  %v6193 = vpack.c.b16 %v6145, %v6143
  %v6194 = vpack.c.b16 %v6146, %v6144
  %v6195 = vpack.c.b16 %v6149, %v6147
  %v6196 = vpack.c.b16 %v6150, %v6148
  %v6197 = vpack.c.b16 %v6153, %v6151
  %v6198 = vpack.c.b16 %v6154, %v6152
  %v6199 = vpack.c.b16 %v6157, %v6155
  %v6200 = vpack.c.b16 %v6158, %v6156
  %v6201 = vpack.c.b16 %v6161, %v6159
  %v6202 = vpack.c.b16 %v6162, %v6160
  %v6203 = vpack.c.b16 %v6165, %v6163
  %v6204 = vpack.c.b16 %v6166, %v6164
  %v6205 = vpack.c.b16 %v6169, %v6167
  %v6206 = vpack.c.b16 %v6170, %v6168
  %v6207 = vpack.c.b16 %v6173, %v6171
  %v6208 = vpack.c.b16 %v6174, %v6172
  %v6209 = vpack.c.b16 %v6177, %v6175
  %v6210 = vpack.c.b16 %v6178, %v6176
  %6243 = vmatpush.bf16.msra.mxu0 %v6193
  %6244 = vmatpush.bf16.msra.mxu0 %v6191
  %6245 = vmatpush.bf16.msra.mxu0 %v6189
  %6246 = vmatpush.bf16.msra.mxu0 %v6187
  %6247 = vmatpush.bf16.msra.mxu0 %v6185
  %6248 = vmatpush.bf16.msra.mxu0 %v6183
  %6249 = vmatpush.bf16.msra.mxu0 %v6181
  %6250 = vmatpush.bf16.msra.mxu0 %v6179
  %6251 = vmatmul.bf16.gmra.mxu0 %v6031
  %v6252 = vpop.f32.mrf.mxu0
  %v6253 = vadd.f32 %v6079, %v6252
  %v6254 = vpop.f32.mrf.mxu0
  %v6255 = vadd.f32 %v6079, %v6254
  %6256 = vmatmul.bf16.gmra.mxu0 %v6033
  %v6257 = vpop.f32.mrf.mxu0
  %v6258 = vadd.f32 %v6079, %v6257
  %v6259 = vpop.f32.mrf.mxu0
  %v6260 = vadd.f32 %v6079, %v6259
  %6261 = vmatmul.bf16.gmra.mxu0 %v6035
  %v6262 = vpop.f32.mrf.mxu0
  %v6263 = vadd.f32 %v6079, %v6262
  %v6264 = vpop.f32.mrf.mxu0
  %v6265 = vadd.f32 %v6079, %v6264
  %6266 = vmatmul.bf16.gmra.mxu0 %v6037
  %v6267 = vpop.f32.mrf.mxu0
  %v6268 = vadd.f32 %v6079, %v6267
  %v6269 = vpop.f32.mrf.mxu0
  %v6270 = vadd.f32 %v6079, %v6269
  %6271 = vmatmul.bf16.gmra.mxu0 %v6039
  %v6272 = vpop.f32.mrf.mxu0
  %v6273 = vadd.f32 %v6079, %v6272
  %v6274 = vpop.f32.mrf.mxu0
  %v6275 = vadd.f32 %v6079, %v6274
  %6276 = vmatmul.bf16.gmra.mxu0 %v6041
  %v6277 = vpop.f32.mrf.mxu0
  %v6278 = vadd.f32 %v6079, %v6277
  %v6279 = vpop.f32.mrf.mxu0
  %v6280 = vadd.f32 %v6079, %v6279
  %6281 = vmatmul.bf16.gmra.mxu0 %v6043
  %v6282 = vpop.f32.mrf.mxu0
  %v6283 = vadd.f32 %v6079, %v6282
  %v6284 = vpop.f32.mrf.mxu0
  %6285 = vdwg.mxu0
  %6286 = vmatpush.bf16.msra.mxu0 %v6209
  %6287 = vmatpush.bf16.msra.mxu0 %v6207
  %6288 = vmatpush.bf16.msra.mxu0 %v6205
  %6289 = vmatpush.bf16.msra.mxu0 %v6203
  %6290 = vmatpush.bf16.msra.mxu0 %v6201
  %6291 = vmatpush.bf16.msra.mxu0 %v6199
  %6292 = vmatpush.bf16.msra.mxu0 %v6197
  %6293 = vmatpush.bf16.msra.mxu0 %v6195
  %6294 = vmatmul.bf16.gmra.mxu0 %v6032
  %v6295 = vpop.f32.mrf.mxu0
  %v6296 = vadd.f32 %v6253, %v6295
  %v6297 = vpop.f32.mrf.mxu0
  %v6298 = vadd.f32 %v6255, %v6297
  %6299 = vmatmul.bf16.gmra.mxu0 %v6034
  %v6300 = vpop.f32.mrf.mxu0
  %v6301 = vadd.f32 %v6258, %v6300
  %v6302 = vpop.f32.mrf.mxu0
  %v6303 = vadd.f32 %v6260, %v6302
  %6304 = vmatmul.bf16.gmra.mxu0 %v6036
  %v6305 = vpop.f32.mrf.mxu0
  %v6306 = vadd.f32 %v6263, %v6305
  %v6307 = vpop.f32.mrf.mxu0
  %v6308 = vadd.f32 %v6265, %v6307
  %6309 = vmatmul.bf16.gmra.mxu0 %v6038
  %v6310 = vpop.f32.mrf.mxu0
  %v6311 = vadd.f32 %v6268, %v6310
  %v6312 = vpop.f32.mrf.mxu0
  %v6313 = vadd.f32 %v6270, %v6312
  %6314 = vmatmul.bf16.gmra.mxu0 %v6040
  %v6315 = vpop.f32.mrf.mxu0
  %v6316 = vadd.f32 %v6273, %v6315
  %v6317 = vpop.f32.mrf.mxu0
  %v6318 = vadd.f32 %v6275, %v6317
  %6319 = vmatmul.bf16.gmra.mxu0 %v6042
  %v6320 = vpop.f32.mrf.mxu0
  %v6321 = vadd.f32 %v6278, %v6320
  %v6322 = vpop.f32.mrf.mxu0
  %v6323 = vadd.f32 %v6280, %v6322
  %6324 = vmatmul.bf16.gmra.mxu0 %v6044
  %v6325 = vpop.f32.mrf.mxu0
  %v6326 = vadd.f32 %v6283, %v6325
  %v6327 = vpop.f32.mrf.mxu0
  %6328 = vdwg.mxu0
  %6329 = vmatpush.bf16.msra.mxu0 %v6194
  %6330 = vmatpush.bf16.msra.mxu0 %v6192
  %6331 = vmatpush.bf16.msra.mxu0 %v6190
  %6332 = vmatpush.bf16.msra.mxu0 %v6188
  %6333 = vmatpush.bf16.msra.mxu0 %v6186
  %6334 = vmatpush.bf16.msra.mxu0 %v6184
  %6335 = vmatpush.bf16.msra.mxu0 %v6182
  %6336 = vmatpush.bf16.msra.mxu0 %v6180
  %6337 = vmatmul.bf16.gmra.mxu0 %v6031
  %v6338 = vpop.f32.mrf.mxu0
  %v6339 = vadd.f32 %v6080, %v6338
  %v6340 = vpop.f32.mrf.mxu0
  %v6341 = vadd.f32 %v6080, %v6340
  %6342 = vmatmul.bf16.gmra.mxu0 %v6033
  %v6343 = vpop.f32.mrf.mxu0
  %v6344 = vadd.f32 %v6080, %v6343
  %v6345 = vpop.f32.mrf.mxu0
  %v6346 = vadd.f32 %v6080, %v6345
  %6347 = vmatmul.bf16.gmra.mxu0 %v6035
  %v6348 = vpop.f32.mrf.mxu0
  %v6349 = vadd.f32 %v6080, %v6348
  %v6350 = vpop.f32.mrf.mxu0
  %v6351 = vadd.f32 %v6080, %v6350
  %6352 = vmatmul.bf16.gmra.mxu0 %v6037
  %v6353 = vpop.f32.mrf.mxu0
  %v6354 = vadd.f32 %v6080, %v6353
  %v6355 = vpop.f32.mrf.mxu0
  %v6356 = vadd.f32 %v6080, %v6355
  %6357 = vmatmul.bf16.gmra.mxu0 %v6039
  %v6358 = vpop.f32.mrf.mxu0
  %v6359 = vadd.f32 %v6080, %v6358
  %v6360 = vpop.f32.mrf.mxu0
  %v6361 = vadd.f32 %v6080, %v6360
  %6362 = vmatmul.bf16.gmra.mxu0 %v6041
  %v6363 = vpop.f32.mrf.mxu0
  %v6364 = vadd.f32 %v6080, %v6363
  %v6365 = vpop.f32.mrf.mxu0
  %v6366 = vadd.f32 %v6080, %v6365
  %6367 = vmatmul.bf16.gmra.mxu0 %v6043
  %v6368 = vpop.f32.mrf.mxu0
  %v6369 = vadd.f32 %v6080, %v6368
  %v6370 = vpop.f32.mrf.mxu0
  %6371 = vdwg.mxu0
  %6372 = vmatpush.bf16.msra.mxu0 %v6210
  %6373 = vmatpush.bf16.msra.mxu0 %v6208
  %6374 = vmatpush.bf16.msra.mxu0 %v6206
  %6375 = vmatpush.bf16.msra.mxu0 %v6204
  %6376 = vmatpush.bf16.msra.mxu0 %v6202
  %6377 = vmatpush.bf16.msra.mxu0 %v6200
  %6378 = vmatpush.bf16.msra.mxu0 %v6198
  %6379 = vmatpush.bf16.msra.mxu0 %v6196
  %6380 = vmatmul.bf16.gmra.mxu0 %v6032
  %v6381 = vpop.f32.mrf.mxu0
  %v6382 = vadd.f32 %v6339, %v6381
  %v6383 = vpop.f32.mrf.mxu0
  %v6384 = vadd.f32 %v6341, %v6383
  %6385 = vmatmul.bf16.gmra.mxu0 %v6034
  %v6386 = vpop.f32.mrf.mxu0
  %v6387 = vadd.f32 %v6344, %v6386
  %v6388 = vpop.f32.mrf.mxu0
  %v6389 = vadd.f32 %v6346, %v6388
  %6390 = vmatmul.bf16.gmra.mxu0 %v6036
  %v6391 = vpop.f32.mrf.mxu0
  %v6392 = vadd.f32 %v6349, %v6391
  %v6393 = vpop.f32.mrf.mxu0
  %v6394 = vadd.f32 %v6351, %v6393
  %6395 = vmatmul.bf16.gmra.mxu0 %v6038
  %v6396 = vpop.f32.mrf.mxu0
  %v6397 = vadd.f32 %v6354, %v6396
  %v6398 = vpop.f32.mrf.mxu0
  %v6399 = vadd.f32 %v6356, %v6398
  %6400 = vmatmul.bf16.gmra.mxu0 %v6040
  %v6401 = vpop.f32.mrf.mxu0
  %v6402 = vadd.f32 %v6359, %v6401
  %v6403 = vpop.f32.mrf.mxu0
  %v6404 = vadd.f32 %v6361, %v6403
  %6405 = vmatmul.bf16.gmra.mxu0 %v6042
  %v6406 = vpop.f32.mrf.mxu0
  %v6407 = vadd.f32 %v6364, %v6406
  %v6408 = vpop.f32.mrf.mxu0
  %v6409 = vadd.f32 %v6366, %v6408
  %6410 = vmatmul.bf16.gmra.mxu0 %v6044
  %v6411 = vpop.f32.mrf.mxu0
  %v6412 = vadd.f32 %v6369, %v6411
  %v6413 = vpop.f32.mrf.mxu0
  %6414 = vdwg.mxu0
  %v6415 = vmax.f32 %v6296, 0.0
  %v6416 = vmax.f32 %v6382, 0.0
  %v6417 = vmax.f32 %v6298, 0.0
  %v6418 = vmax.f32 %v6384, 0.0
  %v6419 = vmax.f32 %v6301, 0.0
  %v6420 = vmax.f32 %v6387, 0.0
  %v6421 = vmax.f32 %v6303, 0.0
  %v6422 = vmax.f32 %v6389, 0.0
  %v6423 = vmax.f32 %v6306, 0.0
  %v6424 = vmax.f32 %v6392, 0.0
  %v6425 = vmax.f32 %v6308, 0.0
  %v6426 = vmax.f32 %v6394, 0.0
  %v6427 = vmax.f32 %v6311, 0.0
  %v6428 = vmax.f32 %v6397, 0.0
  %v6429 = vmax.f32 %v6313, 0.0
  %v6430 = vmax.f32 %v6399, 0.0
  %v6431 = vmax.f32 %v6316, 0.0
  %v6432 = vmax.f32 %v6402, 0.0
  %v6433 = vmax.f32 %v6318, 0.0
  %v6434 = vmax.f32 %v6404, 0.0
  %v6435 = vmax.f32 %v6321, 0.0
  %v6436 = vmax.f32 %v6407, 0.0
  %v6437 = vmax.f32 %v6323, 0.0
  %v6438 = vmax.f32 %v6409, 0.0
  %v6439 = vmax.f32 %v6326, 0.0
  %v6440 = vmax.f32 %v6412, 0.0
  %v6441 = vpack.c.bf16 %v6416, %v6415
  %v6442 = vpack.c.bf16 %v6418, %v6417
  %v6443 = vpack.c.bf16 %v6420, %v6419
  %v6444 = vpack.c.bf16 %v6422, %v6421
  %v6445 = vpack.c.bf16 %v6424, %v6423
  %v6446 = vpack.c.bf16 %v6426, %v6425
  %v6447 = vpack.c.bf16 %v6428, %v6427
  %v6448 = vpack.c.bf16 %v6430, %v6429
  %v6449 = vpack.c.bf16 %v6432, %v6431
  %v6450 = vpack.c.bf16 %v6434, %v6433
  %v6451 = vpack.c.bf16 %v6436, %v6435
  %v6452 = vpack.c.bf16 %v6438, %v6437
  %v6453 = vpack.c.bf16 %v6440, %v6439
  %6454 = vst [vmem:[%s7] sm:$0xff] %v6441
  %6455 = vst [vmem:[%s7 + $0x8] sm:$0xff] %v6442
  %6456 = vst [vmem:[%s7 + $0x10] sm:$0xff] %v6443
  %6457 = vst [vmem:[%s7 + $0x18] sm:$0xff] %v6444
  %6458 = vst [vmem:[%s7 + $0x20] sm:$0xff] %v6445
  %6459 = vst [vmem:[%s7 + $0x28] sm:$0xff] %v6446
  %6460 = vst [vmem:[%s7 + $0x30] sm:$0xff] %v6447
  %6461 = vst [vmem:[%s7 + $0x38] sm:$0xff] %v6448
  %6462 = vst [vmem:[%s7 + $0x40] sm:$0xff] %v6449
  %6463 = vst [vmem:[%s7 + $0x48] sm:$0xff] %v6450
  %6464 = vst [vmem:[%s7 + $0x50] sm:$0xff] %v6451
  %6465 = vst [vmem:[%s7 + $0x58] sm:$0xff] %v6452
  %6466 = vst [vmem:[%s7 + $0x60] sm:$0xff] %v6453
  // Predicated region
  $region30: #{net_forward.5} parent=0 // pred_check
    _
  $region31: #{net_forward.5} parent=0 // pred_check_branch
    %6468 = sbr.rel (0) target = $region33
  $region32: #{net_forward.5} parent=0 // pred_region
    _
  $region33: #{net_forward.5} parent=0 // pred_fallthru
    _
  // Predicated region
  $region34: #{net_forward.5} parent=0 // pred_check
    _
  $region35: #{net_forward.5} parent=0 // pred_check_branch
    %6470 = sbr.rel (0) target = $region37
  $region36: #{net_forward.5} parent=0 // pred_region
    _
  $region37: #{net_forward.5} parent=0 // pred_fallthru
    _

// kernel: net_forward.6
$region0: #{net_forward.6}
  #allocation0 [shape = 'u32[]', space=smem, size = 0x4, offset = 0x4, fixed_abs, tag = 'smem constant byte address 0x4 - core index']
  #allocation1 [shape = 'u32[72,128]{1,0:T(1,128)}', space=vmem, size = 0x9000, scoped, tag = 'internal scratch']
  %s0 = inlined_call_operand.vmem [shape: bf16[24,2304], index: 0, kind: input, shape index: {}]
  %s1 = inlined_call_operand.vmem [shape: bf16[2304,384], index: 1, kind: input, shape index: {}]
  %s2 = inlined_call_operand.vmem [shape: f32[1,384], index: 2, kind: input, shape index: {}]
  %s3 = inlined_call_operand.vmem [shape: bf16[384,384], index: 3, kind: input, shape index: {}]
  %s4 = inlined_call_operand.vmem [shape: f32[1,384], index: 4, kind: input, shape index: {}]
  %s5 = inlined_call_operand.vmem [shape: bf16[384,384], index: 5, kind: input, shape index: {}]
  %s6 = inlined_call_operand.vmem [shape: f32[1,384], index: 6, kind: input, shape index: {}]
  %s7 = inlined_call_operand.vmem [shape: bf16[24,384], index: 7, kind: output, shape index: {}]
  %s8 = sld [smem:[#allocation0]]
  $region38: #{net_forward.6} parent=0
    _
  %s10 = ssub.s32 1, %s8
  %s11 = scalar_select 0, %s10, %s8
  // Predicated region
  $region2: #{net_forward.6} parent=0 // pred_check
    _
  $region3: #{net_forward.6} parent=0 // pred_check_branch
    %13 = sbr.rel (0) target = $region5
  $region4: #{net_forward.6} parent=0 // pred_region
    _
  $region5: #{net_forward.6} parent=0 // pred_fallthru
    _
  // Predicated region
  $region6: #{net_forward.6} parent=0 // pred_check
    _
  $region7: #{net_forward.6} parent=0 // pred_check_branch
    %15 = sbr.rel (0) target = $region9
  $region8: #{net_forward.6} parent=0 // pred_region
    _
  $region9: #{net_forward.6} parent=0 // pred_fallthru
    _
  // Predicated region
  $region10: #{net_forward.6} parent=0 // pred_check
    _
  $region11: #{net_forward.6} parent=0 // pred_check_branch
    %17 = sbr.rel (0) target = $region13
  $region12: #{net_forward.6} parent=0 // pred_region
    _
  $region13: #{net_forward.6} parent=0 // pred_fallthru
    _
  // Predicated region
  $region14: #{net_forward.6} parent=0 // pred_check
    _
  $region15: #{net_forward.6} parent=0 // pred_check_branch
    %19 = sbr.rel (0) target = $region17
  $region16: #{net_forward.6} parent=0 // pred_region
    _
  $region17: #{net_forward.6} parent=0 // pred_fallthru
    _
  // Predicated region
  $region18: #{net_forward.6} parent=0 // pred_check
    _
  $region19: #{net_forward.6} parent=0 // pred_check_branch
    %21 = sbr.rel (0) target = $region21
  $region20: #{net_forward.6} parent=0 // pred_region
    _
  $region21: #{net_forward.6} parent=0 // pred_fallthru
    _
  // Predicated region
  $region22: #{net_forward.6} parent=0 // pred_check
    _
  $region23: #{net_forward.6} parent=0 // pred_check_branch
    %23 = sbr.rel (0) target = $region25
  $region24: #{net_forward.6} parent=0 // pred_region
    _
  $region25: #{net_forward.6} parent=0 // pred_fallthru
    _
  // Predicated region
  $region26: #{net_forward.6} parent=0 // pred_check
    _
  $region27: #{net_forward.6} parent=0 // pred_check_branch
    %25 = sbr.rel (0) target = $region29
  $region28: #{net_forward.6} parent=0 // pred_region
    _
  $region29: #{net_forward.6} parent=0 // pred_fallthru
    _
  %v26 = vld [vmem:[%s0] sm:$0xff]
  %v27 = vld [vmem:[%s0 + $0x8] sm:$0xff]
  %v28 = vld [vmem:[%s0 + $0x10] sm:$0xff]
  %v29 = vld [vmem:[%s0 + $0x18] sm:$0xff]
  %v30 = vld [vmem:[%s0 + $0x20] sm:$0xff]
  %v31 = vld [vmem:[%s0 + $0x28] sm:$0xff]
  %v32 = vld [vmem:[%s0 + $0x30] sm:$0xff]
  %v33 = vld [vmem:[%s0 + $0x38] sm:$0xff]
  %v34 = vld [vmem:[%s0 + $0x40] sm:$0xff]
  %v35 = vld [vmem:[%s0 + $0x48] sm:$0xff]
  %v36 = vld [vmem:[%s0 + $0x50] sm:$0xff]
  %v37 = vld [vmem:[%s0 + $0x58] sm:$0xff]
  %v38 = vld [vmem:[%s0 + $0x60] sm:$0xff]
  %v39 = vld [vmem:[%s0 + $0x68] sm:$0xff]
  %v40 = vld [vmem:[%s0 + $0x70] sm:$0xff]
  %v41 = vld [vmem:[%s0 + $0x78] sm:$0xff]
  %v42 = vld [vmem:[%s0 + $0x80] sm:$0xff]
  %v43 = vld [vmem:[%s0 + $0x88] sm:$0xff]
  %v44 = vld [vmem:[%s0 + $0x90] sm:$0xff]
  %v45 = vld [vmem:[%s0 + $0x98] sm:$0xff]
  %v46 = vld [vmem:[%s0 + $0xa0] sm:$0xff]
  %v47 = vld [vmem:[%s0 + $0xa8] sm:$0xff]
  %v48 = vld [vmem:[%s0 + $0xb0] sm:$0xff]
  %v49 = vld [vmem:[%s0 + $0xb8] sm:$0xff]
  %v50 = vld [vmem:[%s0 + $0xc0] sm:$0xff]
  %v51 = vld [vmem:[%s0 + $0xc8] sm:$0xff]
  %v52 = vld [vmem:[%s0 + $0xd0] sm:$0xff]
  %v53 = vld [vmem:[%s1] sm:$0xff]
  %v54 = vld [vmem:[%s1 + $0x8] sm:$0xf]
  %v55 = vld [vmem:[%s1 + $0xc] sm:$0xff]
  %v56 = vld [vmem:[%s1 + $0x14] sm:$0xf]
  %v57 = vld [vmem:[%s1 + $0x18] sm:$0xff]
  %v58 = vld [vmem:[%s1 + $0x20] sm:$0xf]
  %v59 = vld [vmem:[%s1 + $0x24] sm:$0xff]
  %v60 = vld [vmem:[%s1 + $0x2c] sm:$0xf]
  %v61 = vld [vmem:[%s1 + $0x30] sm:$0xff]
  %v62 = vld [vmem:[%s1 + $0x38] sm:$0xf]
  %v63 = vld [vmem:[%s1 + $0x3c] sm:$0xff]
  %v64 = vld [vmem:[%s1 + $0x44] sm:$0xf]
  %v65 = vld [vmem:[%s1 + $0x48] sm:$0xff]
  %v66 = vld [vmem:[%s1 + $0x50] sm:$0xf]
  %v67 = vld [vmem:[%s1 + $0x54] sm:$0xff]
  %v68 = vld [vmem:[%s1 + $0x5c] sm:$0xf]
  %v69 = vld [vmem:[%s1 + $0x60] sm:$0xff]
  %v70 = vld [vmem:[%s1 + $0x68] sm:$0xf]
  %v71 = vld [vmem:[%s1 + $0x6c] sm:$0xff]
  %v72 = vld [vmem:[%s1 + $0x74] sm:$0xf]
  %v73 = vld [vmem:[%s1 + $0x78] sm:$0xff]
  %v74 = vld [vmem:[%s1 + $0x80] sm:$0xf]
  %v75 = vld [vmem:[%s1 + $0x84] sm:$0xff]
  %v76 = vld [vmem:[%s1 + $0x8c] sm:$0xf]
  %v77 = vld [vmem:[%s1 + $0x90] sm:$0xff]
  %v78 = vld [vmem:[%s1 + $0x98] sm:$0xf]
  %v79 = vld [vmem:[%s1 + $0x9c] sm:$0xff]
  %v80 = vld [vmem:[%s1 + $0xa4] sm:$0xf]
  %v81 = vld [vmem:[%s1 + $0xa8] sm:$0xff]
  %v82 = vld [vmem:[%s1 + $0xb0] sm:$0xf]
  %v83 = vld [vmem:[%s1 + $0xb4] sm:$0xff]
  %v84 = vld [vmem:[%s1 + $0xbc] sm:$0xf]
  %v85 = vld [vmem:[%s1 + $0xc0] sm:$0xff]
  %v86 = vld [vmem:[%s1 + $0xc8] sm:$0xf]
  %v87 = vld [vmem:[%s1 + $0xcc] sm:$0xff]
  %v88 = vld [vmem:[%s1 + $0xd4] sm:$0xf]
  %v89 = vld [vmem:[%s1 + $0xd8] sm:$0xff]
  %v90 = vld [vmem:[%s1 + $0xe0] sm:$0xf]
  %v91 = vld [vmem:[%s1 + $0xe4] sm:$0xff]
  %v92 = vld [vmem:[%s1 + $0xec] sm:$0xf]
  %v93 = vld [vmem:[%s1 + $0xf0] sm:$0xff]
  %v94 = vld [vmem:[%s1 + $0xf8] sm:$0xf]
  %v95 = vld [vmem:[%s1 + $0xfc] sm:$0xff]
  %v96 = vld [vmem:[%s1 + $0x104] sm:$0xf]
  %v97 = vld [vmem:[%s1 + $0x108] sm:$0xff]
  %v98 = vld [vmem:[%s1 + $0x110] sm:$0xf]
  %v99 = vld [vmem:[%s1 + $0x114] sm:$0xff]
  %v100 = vld [vmem:[%s1 + $0x11c] sm:$0xf]
  %v101 = vld [vmem:[%s1 + $0x120] sm:$0xff]
  %v102 = vld [vmem:[%s1 + $0x128] sm:$0xf]
  %v103 = vld [vmem:[%s1 + $0x12c] sm:$0xff]
  %v104 = vld [vmem:[%s1 + $0x134] sm:$0xf]
  %v105 = vld [vmem:[%s1 + $0x138] sm:$0xff]
  %v106 = vld [vmem:[%s1 + $0x140] sm:$0xf]
  %v107 = vld [vmem:[%s1 + $0x144] sm:$0xff]
  %v108 = vld [vmem:[%s1 + $0x14c] sm:$0xf]
  %v109 = vld [vmem:[%s1 + $0x150] sm:$0xff]
  %v110 = vld [vmem:[%s1 + $0x158] sm:$0xf]
  %v111 = vld [vmem:[%s1 + $0x15c] sm:$0xff]
  %v112 = vld [vmem:[%s1 + $0x164] sm:$0xf]
  %v113 = vld [vmem:[%s1 + $0x168] sm:$0xff]
  %v114 = vld [vmem:[%s1 + $0x170] sm:$0xf]
  %v115 = vld [vmem:[%s1 + $0x174] sm:$0xff]
  %v116 = vld [vmem:[%s1 + $0x17c] sm:$0xf]
  %v117 = vld [vmem:[%s1 + $0x180] sm:$0xff]
  %v118 = vld [vmem:[%s1 + $0x188] sm:$0xf]
  %v119 = vld [vmem:[%s1 + $0x18c] sm:$0xff]
  %v120 = vld [vmem:[%s1 + $0x194] sm:$0xf]
  %v121 = vld [vmem:[%s1 + $0x198] sm:$0xff]
  %v122 = vld [vmem:[%s1 + $0x1a0] sm:$0xf]
  %v123 = vld [vmem:[%s1 + $0x1a4] sm:$0xff]
  %v124 = vld [vmem:[%s1 + $0x1ac] sm:$0xf]
  %v125 = vld [vmem:[%s1 + $0x1b0] sm:$0xff]
  %v126 = vld [vmem:[%s1 + $0x1b8] sm:$0xf]
  %v127 = vld [vmem:[%s1 + $0x1bc] sm:$0xff]
  %v128 = vld [vmem:[%s1 + $0x1c4] sm:$0xf]
  %v129 = vld [vmem:[%s1 + $0x1c8] sm:$0xff]
  %v130 = vld [vmem:[%s1 + $0x1d0] sm:$0xf]
  %v131 = vld [vmem:[%s1 + $0x1d4] sm:$0xff]
  %v132 = vld [vmem:[%s1 + $0x1dc] sm:$0xf]
  %v133 = vld [vmem:[%s1 + $0x1e0] sm:$0xff]
  %v134 = vld [vmem:[%s1 + $0x1e8] sm:$0xf]
  %v135 = vld [vmem:[%s1 + $0x1ec] sm:$0xff]
  %v136 = vld [vmem:[%s1 + $0x1f4] sm:$0xf]
  %v137 = vld [vmem:[%s1 + $0x1f8] sm:$0xff]
  %v138 = vld [vmem:[%s1 + $0x200] sm:$0xf]
  %v139 = vld [vmem:[%s1 + $0x204] sm:$0xff]
  %v140 = vld [vmem:[%s1 + $0x20c] sm:$0xf]
  %v141 = vld [vmem:[%s1 + $0x210] sm:$0xff]
  %v142 = vld [vmem:[%s1 + $0x218] sm:$0xf]
  %v143 = vld [vmem:[%s1 + $0x21c] sm:$0xff]
  %v144 = vld [vmem:[%s1 + $0x224] sm:$0xf]
  %v145 = vld [vmem:[%s1 + $0x228] sm:$0xff]
  %v146 = vld [vmem:[%s1 + $0x230] sm:$0xf]
  %v147 = vld [vmem:[%s1 + $0x234] sm:$0xff]
  %v148 = vld [vmem:[%s1 + $0x23c] sm:$0xf]
  %v149 = vld [vmem:[%s1 + $0x240] sm:$0xff]
  %v150 = vld [vmem:[%s1 + $0x248] sm:$0xf]
  %v151 = vld [vmem:[%s1 + $0x24c] sm:$0xff]
  %v152 = vld [vmem:[%s1 + $0x254] sm:$0xf]
  %v153 = vld [vmem:[%s1 + $0x258] sm:$0xff]
  %v154 = vld [vmem:[%s1 + $0x260] sm:$0xf]
  %v155 = vld [vmem:[%s1 + $0x264] sm:$0xff]
  %v156 = vld [vmem:[%s1 + $0x26c] sm:$0xf]
  %v157 = vld [vmem:[%s1 + $0x270] sm:$0xff]
  %v158 = vld [vmem:[%s1 + $0x278] sm:$0xf]
  %v159 = vld [vmem:[%s1 + $0x27c] sm:$0xff]
  %v160 = vld [vmem:[%s1 + $0x284] sm:$0xf]
  %v161 = vld [vmem:[%s1 + $0x288] sm:$0xff]
  %v162 = vld [vmem:[%s1 + $0x290] sm:$0xf]
  %v163 = vld [vmem:[%s1 + $0x294] sm:$0xff]
  %v164 = vld [vmem:[%s1 + $0x29c] sm:$0xf]
  %v165 = vld [vmem:[%s1 + $0x2a0] sm:$0xff]
  %v166 = vld [vmem:[%s1 + $0x2a8] sm:$0xf]
  %v167 = vld [vmem:[%s1 + $0x2ac] sm:$0xff]
  %v168 = vld [vmem:[%s1 + $0x2b4] sm:$0xf]
  %v169 = vld [vmem:[%s1 + $0x2b8] sm:$0xff]
  %v170 = vld [vmem:[%s1 + $0x2c0] sm:$0xf]
  %v171 = vld [vmem:[%s1 + $0x2c4] sm:$0xff]
  %v172 = vld [vmem:[%s1 + $0x2cc] sm:$0xf]
  %v173 = vld [vmem:[%s1 + $0x2d0] sm:$0xff]
  %v174 = vld [vmem:[%s1 + $0x2d8] sm:$0xf]
  %v175 = vld [vmem:[%s1 + $0x2dc] sm:$0xff]
  %v176 = vld [vmem:[%s1 + $0x2e4] sm:$0xf]
  %v177 = vld [vmem:[%s1 + $0x2e8] sm:$0xff]
  %v178 = vld [vmem:[%s1 + $0x2f0] sm:$0xf]
  %v179 = vld [vmem:[%s1 + $0x2f4] sm:$0xff]
  %v180 = vld [vmem:[%s1 + $0x2fc] sm:$0xf]
  %v181 = vld [vmem:[%s1 + $0x300] sm:$0xff]
  %v182 = vld [vmem:[%s1 + $0x308] sm:$0xf]
  %v183 = vld [vmem:[%s1 + $0x30c] sm:$0xff]
  %v184 = vld [vmem:[%s1 + $0x314] sm:$0xf]
  %v185 = vld [vmem:[%s1 + $0x318] sm:$0xff]
  %v186 = vld [vmem:[%s1 + $0x320] sm:$0xf]
  %v187 = vld [vmem:[%s1 + $0x324] sm:$0xff]
  %v188 = vld [vmem:[%s1 + $0x32c] sm:$0xf]
  %v189 = vld [vmem:[%s1 + $0x330] sm:$0xff]
  %v190 = vld [vmem:[%s1 + $0x338] sm:$0xf]
  %v191 = vld [vmem:[%s1 + $0x33c] sm:$0xff]
  %v192 = vld [vmem:[%s1 + $0x344] sm:$0xf]
  %v193 = vld [vmem:[%s1 + $0x348] sm:$0xff]
  %v194 = vld [vmem:[%s1 + $0x350] sm:$0xf]
  %v195 = vld [vmem:[%s1 + $0x354] sm:$0xff]
  %v196 = vld [vmem:[%s1 + $0x35c] sm:$0xf]
  %v197 = vld [vmem:[%s1 + $0x360] sm:$0xff]
  %v198 = vld [vmem:[%s1 + $0x368] sm:$0xf]
  %v199 = vld [vmem:[%s1 + $0x36c] sm:$0xff]
  %v200 = vld [vmem:[%s1 + $0x374] sm:$0xf]
  %v201 = vld [vmem:[%s1 + $0x378] sm:$0xff]
  %v202 = vld [vmem:[%s1 + $0x380] sm:$0xf]
  %v203 = vld [vmem:[%s1 + $0x384] sm:$0xff]
  %v204 = vld [vmem:[%s1 + $0x38c] sm:$0xf]
  %v205 = vld [vmem:[%s1 + $0x390] sm:$0xff]
  %v206 = vld [vmem:[%s1 + $0x398] sm:$0xf]
  %v207 = vld [vmem:[%s1 + $0x39c] sm:$0xff]
  %v208 = vld [vmem:[%s1 + $0x3a4] sm:$0xf]
  %v209 = vld [vmem:[%s1 + $0x3a8] sm:$0xff]
  %v210 = vld [vmem:[%s1 + $0x3b0] sm:$0xf]
  %v211 = vld [vmem:[%s1 + $0x3b4] sm:$0xff]
  %v212 = vld [vmem:[%s1 + $0x3bc] sm:$0xf]
  %v213 = vld [vmem:[%s1 + $0x3c0] sm:$0xff]
  %v214 = vld [vmem:[%s1 + $0x3c8] sm:$0xf]
  %v215 = vld [vmem:[%s1 + $0x3cc] sm:$0xff]
  %v216 = vld [vmem:[%s1 + $0x3d4] sm:$0xf]
  %v217 = vld [vmem:[%s1 + $0x3d8] sm:$0xff]
  %v218 = vld [vmem:[%s1 + $0x3e0] sm:$0xf]
  %v219 = vld [vmem:[%s1 + $0x3e4] sm:$0xff]
  %v220 = vld [vmem:[%s1 + $0x3ec] sm:$0xf]
  %v221 = vld [vmem:[%s1 + $0x3f0] sm:$0xff]
  %v222 = vld [vmem:[%s1 + $0x3f8] sm:$0xf]
  %v223 = vld [vmem:[%s1 + $0x3fc] sm:$0xff]
  %v224 = vld [vmem:[%s1 + $0x404] sm:$0xf]
  %v225 = vld [vmem:[%s1 + $0x408] sm:$0xff]
  %v226 = vld [vmem:[%s1 + $0x410] sm:$0xf]
  %v227 = vld [vmem:[%s1 + $0x414] sm:$0xff]
  %v228 = vld [vmem:[%s1 + $0x41c] sm:$0xf]
  %v229 = vld [vmem:[%s1 + $0x420] sm:$0xff]
  %v230 = vld [vmem:[%s1 + $0x428] sm:$0xf]
  %v231 = vld [vmem:[%s1 + $0x42c] sm:$0xff]
  %v232 = vld [vmem:[%s1 + $0x434] sm:$0xf]
  %v233 = vld [vmem:[%s1 + $0x438] sm:$0xff]
  %v234 = vld [vmem:[%s1 + $0x440] sm:$0xf]
  %v235 = vld [vmem:[%s1 + $0x444] sm:$0xff]
  %v236 = vld [vmem:[%s1 + $0x44c] sm:$0xf]
  %v237 = vld [vmem:[%s1 + $0x450] sm:$0xff]
  %v238 = vld [vmem:[%s1 + $0x458] sm:$0xf]
  %v239 = vld [vmem:[%s1 + $0x45c] sm:$0xff]
  %v240 = vld [vmem:[%s1 + $0x464] sm:$0xf]
  %v241 = vld [vmem:[%s1 + $0x468] sm:$0xff]
  %v242 = vld [vmem:[%s1 + $0x470] sm:$0xf]
  %v243 = vld [vmem:[%s1 + $0x474] sm:$0xff]
  %v244 = vld [vmem:[%s1 + $0x47c] sm:$0xf]
  %v245 = vld [vmem:[%s1 + $0x480] sm:$0xff]
  %v246 = vld [vmem:[%s1 + $0x488] sm:$0xf]
  %v247 = vld [vmem:[%s1 + $0x48c] sm:$0xff]
  %v248 = vld [vmem:[%s1 + $0x494] sm:$0xf]
  %v249 = vld [vmem:[%s1 + $0x498] sm:$0xff]
  %v250 = vld [vmem:[%s1 + $0x4a0] sm:$0xf]
  %v251 = vld [vmem:[%s1 + $0x4a4] sm:$0xff]
  %v252 = vld [vmem:[%s1 + $0x4ac] sm:$0xf]
  %v253 = vld [vmem:[%s1 + $0x4b0] sm:$0xff]
  %v254 = vld [vmem:[%s1 + $0x4b8] sm:$0xf]
  %v255 = vld [vmem:[%s1 + $0x4bc] sm:$0xff]
  %v256 = vld [vmem:[%s1 + $0x4c4] sm:$0xf]
  %v257 = vld [vmem:[%s1 + $0x4c8] sm:$0xff]
  %v258 = vld [vmem:[%s1 + $0x4d0] sm:$0xf]
  %v259 = vld [vmem:[%s1 + $0x4d4] sm:$0xff]
  %v260 = vld [vmem:[%s1 + $0x4dc] sm:$0xf]
  %v261 = vld [vmem:[%s1 + $0x4e0] sm:$0xff]
  %v262 = vld [vmem:[%s1 + $0x4e8] sm:$0xf]
  %v263 = vld [vmem:[%s1 + $0x4ec] sm:$0xff]
  %v264 = vld [vmem:[%s1 + $0x4f4] sm:$0xf]
  %v265 = vld [vmem:[%s1 + $0x4f8] sm:$0xff]
  %v266 = vld [vmem:[%s1 + $0x500] sm:$0xf]
  %v267 = vld [vmem:[%s1 + $0x504] sm:$0xff]
  %v268 = vld [vmem:[%s1 + $0x50c] sm:$0xf]
  %v269 = vld [vmem:[%s1 + $0x510] sm:$0xff]
  %v270 = vld [vmem:[%s1 + $0x518] sm:$0xf]
  %v271 = vld [vmem:[%s1 + $0x51c] sm:$0xff]
  %v272 = vld [vmem:[%s1 + $0x524] sm:$0xf]
  %v273 = vld [vmem:[%s1 + $0x528] sm:$0xff]
  %v274 = vld [vmem:[%s1 + $0x530] sm:$0xf]
  %v275 = vld [vmem:[%s1 + $0x534] sm:$0xff]
  %v276 = vld [vmem:[%s1 + $0x53c] sm:$0xf]
  %v277 = vld [vmem:[%s1 + $0x540] sm:$0xff]
  %v278 = vld [vmem:[%s1 + $0x548] sm:$0xf]
  %v279 = vld [vmem:[%s1 + $0x54c] sm:$0xff]
  %v280 = vld [vmem:[%s1 + $0x554] sm:$0xf]
  %v281 = vld [vmem:[%s1 + $0x558] sm:$0xff]
  %v282 = vld [vmem:[%s1 + $0x560] sm:$0xf]
  %v283 = vld [vmem:[%s1 + $0x564] sm:$0xff]
  %v284 = vld [vmem:[%s1 + $0x56c] sm:$0xf]
  %v285 = vld [vmem:[%s1 + $0x570] sm:$0xff]
  %v286 = vld [vmem:[%s1 + $0x578] sm:$0xf]
  %v287 = vld [vmem:[%s1 + $0x57c] sm:$0xff]
  %v288 = vld [vmem:[%s1 + $0x584] sm:$0xf]
  %v289 = vld [vmem:[%s1 + $0x588] sm:$0xff]
  %v290 = vld [vmem:[%s1 + $0x590] sm:$0xf]
  %v291 = vld [vmem:[%s1 + $0x594] sm:$0xff]
  %v292 = vld [vmem:[%s1 + $0x59c] sm:$0xf]
  %v293 = vld [vmem:[%s1 + $0x5a0] sm:$0xff]
  %v294 = vld [vmem:[%s1 + $0x5a8] sm:$0xf]
  %v295 = vld [vmem:[%s1 + $0x5ac] sm:$0xff]
  %v296 = vld [vmem:[%s1 + $0x5b4] sm:$0xf]
  %v297 = vld [vmem:[%s1 + $0x5b8] sm:$0xff]
  %v298 = vld [vmem:[%s1 + $0x5c0] sm:$0xf]
  %v299 = vld [vmem:[%s1 + $0x5c4] sm:$0xff]
  %v300 = vld [vmem:[%s1 + $0x5cc] sm:$0xf]
  %v301 = vld [vmem:[%s1 + $0x5d0] sm:$0xff]
  %v302 = vld [vmem:[%s1 + $0x5d8] sm:$0xf]
  %v303 = vld [vmem:[%s1 + $0x5dc] sm:$0xff]
  %v304 = vld [vmem:[%s1 + $0x5e4] sm:$0xf]
  %v305 = vld [vmem:[%s1 + $0x5e8] sm:$0xff]
  %v306 = vld [vmem:[%s1 + $0x5f0] sm:$0xf]
  %v307 = vld [vmem:[%s1 + $0x5f4] sm:$0xff]
  %v308 = vld [vmem:[%s1 + $0x5fc] sm:$0xf]
  %v309 = vld [vmem:[%s1 + $0x600] sm:$0xff]
  %v310 = vld [vmem:[%s1 + $0x608] sm:$0xf]
  %v311 = vld [vmem:[%s1 + $0x60c] sm:$0xff]
  %v312 = vld [vmem:[%s1 + $0x614] sm:$0xf]
  %v313 = vld [vmem:[%s1 + $0x618] sm:$0xff]
  %v314 = vld [vmem:[%s1 + $0x620] sm:$0xf]
  %v315 = vld [vmem:[%s1 + $0x624] sm:$0xff]
  %v316 = vld [vmem:[%s1 + $0x62c] sm:$0xf]
  %v317 = vld [vmem:[%s1 + $0x630] sm:$0xff]
  %v318 = vld [vmem:[%s1 + $0x638] sm:$0xf]
  %v319 = vld [vmem:[%s1 + $0x63c] sm:$0xff]
  %v320 = vld [vmem:[%s1 + $0x644] sm:$0xf]
  %v321 = vld [vmem:[%s1 + $0x648] sm:$0xff]
  %v322 = vld [vmem:[%s1 + $0x650] sm:$0xf]
  %v323 = vld [vmem:[%s1 + $0x654] sm:$0xff]
  %v324 = vld [vmem:[%s1 + $0x65c] sm:$0xf]
  %v325 = vld [vmem:[%s1 + $0x660] sm:$0xff]
  %v326 = vld [vmem:[%s1 + $0x668] sm:$0xf]
  %v327 = vld [vmem:[%s1 + $0x66c] sm:$0xff]
  %v328 = vld [vmem:[%s1 + $0x674] sm:$0xf]
  %v329 = vld [vmem:[%s1 + $0x678] sm:$0xff]
  %v330 = vld [vmem:[%s1 + $0x680] sm:$0xf]
  %v331 = vld [vmem:[%s1 + $0x684] sm:$0xff]
  %v332 = vld [vmem:[%s1 + $0x68c] sm:$0xf]
  %v333 = vld [vmem:[%s1 + $0x690] sm:$0xff]
  %v334 = vld [vmem:[%s1 + $0x698] sm:$0xf]
  %v335 = vld [vmem:[%s1 + $0x69c] sm:$0xff]
  %v336 = vld [vmem:[%s1 + $0x6a4] sm:$0xf]
  %v337 = vld [vmem:[%s1 + $0x6a8] sm:$0xff]
  %v338 = vld [vmem:[%s1 + $0x6b0] sm:$0xf]
  %v339 = vld [vmem:[%s1 + $0x6b4] sm:$0xff]
  %v340 = vld [vmem:[%s1 + $0x6bc] sm:$0xf]
  %v341 = vld [vmem:[%s1 + $0x6c0] sm:$0xff]
  %v342 = vld [vmem:[%s1 + $0x6c8] sm:$0xf]
  %v343 = vld [vmem:[%s1 + $0x6cc] sm:$0xff]
  %v344 = vld [vmem:[%s1 + $0x6d4] sm:$0xf]
  %v345 = vld [vmem:[%s1 + $0x6d8] sm:$0xff]
  %v346 = vld [vmem:[%s1 + $0x6e0] sm:$0xf]
  %v347 = vld [vmem:[%s1 + $0x6e4] sm:$0xff]
  %v348 = vld [vmem:[%s1 + $0x6ec] sm:$0xf]
  %v349 = vld [vmem:[%s1 + $0x6f0] sm:$0xff]
  %v350 = vld [vmem:[%s1 + $0x6f8] sm:$0xf]
  %v351 = vld [vmem:[%s1 + $0x6fc] sm:$0xff]
  %v352 = vld [vmem:[%s1 + $0x704] sm:$0xf]
  %v353 = vld [vmem:[%s1 + $0x708] sm:$0xff]
  %v354 = vld [vmem:[%s1 + $0x710] sm:$0xf]
  %v355 = vld [vmem:[%s1 + $0x714] sm:$0xff]
  %v356 = vld [vmem:[%s1 + $0x71c] sm:$0xf]
  %v357 = vld [vmem:[%s1 + $0x720] sm:$0xff]
  %v358 = vld [vmem:[%s1 + $0x728] sm:$0xf]
  %v359 = vld [vmem:[%s1 + $0x72c] sm:$0xff]
  %v360 = vld [vmem:[%s1 + $0x734] sm:$0xf]
  %v361 = vld [vmem:[%s1 + $0x738] sm:$0xff]
  %v362 = vld [vmem:[%s1 + $0x740] sm:$0xf]
  %v363 = vld [vmem:[%s1 + $0x744] sm:$0xff]
  %v364 = vld [vmem:[%s1 + $0x74c] sm:$0xf]
  %v365 = vld [vmem:[%s1 + $0x750] sm:$0xff]
  %v366 = vld [vmem:[%s1 + $0x758] sm:$0xf]
  %v367 = vld [vmem:[%s1 + $0x75c] sm:$0xff]
  %v368 = vld [vmem:[%s1 + $0x764] sm:$0xf]
  %v369 = vld [vmem:[%s1 + $0x768] sm:$0xff]
  %v370 = vld [vmem:[%s1 + $0x770] sm:$0xf]
  %v371 = vld [vmem:[%s1 + $0x774] sm:$0xff]
  %v372 = vld [vmem:[%s1 + $0x77c] sm:$0xf]
  %v373 = vld [vmem:[%s1 + $0x780] sm:$0xff]
  %v374 = vld [vmem:[%s1 + $0x788] sm:$0xf]
  %v375 = vld [vmem:[%s1 + $0x78c] sm:$0xff]
  %v376 = vld [vmem:[%s1 + $0x794] sm:$0xf]
  %v377 = vld [vmem:[%s1 + $0x798] sm:$0xff]
  %v378 = vld [vmem:[%s1 + $0x7a0] sm:$0xf]
  %v379 = vld [vmem:[%s1 + $0x7a4] sm:$0xff]
  %v380 = vld [vmem:[%s1 + $0x7ac] sm:$0xf]
  %v381 = vld [vmem:[%s1 + $0x7b0] sm:$0xff]
  %v382 = vld [vmem:[%s1 + $0x7b8] sm:$0xf]
  %v383 = vld [vmem:[%s1 + $0x7bc] sm:$0xff]
  %v384 = vld [vmem:[%s1 + $0x7c4] sm:$0xf]
  %v385 = vld [vmem:[%s1 + $0x7c8] sm:$0xff]
  %v386 = vld [vmem:[%s1 + $0x7d0] sm:$0xf]
  %v387 = vld [vmem:[%s1 + $0x7d4] sm:$0xff]
  %v388 = vld [vmem:[%s1 + $0x7dc] sm:$0xf]
  %v389 = vld [vmem:[%s1 + $0x7e0] sm:$0xff]
  %v390 = vld [vmem:[%s1 + $0x7e8] sm:$0xf]
  %v391 = vld [vmem:[%s1 + $0x7ec] sm:$0xff]
  %v392 = vld [vmem:[%s1 + $0x7f4] sm:$0xf]
  %v393 = vld [vmem:[%s1 + $0x7f8] sm:$0xff]
  %v394 = vld [vmem:[%s1 + $0x800] sm:$0xf]
  %v395 = vld [vmem:[%s1 + $0x804] sm:$0xff]
  %v396 = vld [vmem:[%s1 + $0x80c] sm:$0xf]
  %v397 = vld [vmem:[%s1 + $0x810] sm:$0xff]
  %v398 = vld [vmem:[%s1 + $0x818] sm:$0xf]
  %v399 = vld [vmem:[%s1 + $0x81c] sm:$0xff]
  %v400 = vld [vmem:[%s1 + $0x824] sm:$0xf]
  %v401 = vld [vmem:[%s1 + $0x828] sm:$0xff]
  %v402 = vld [vmem:[%s1 + $0x830] sm:$0xf]
  %v403 = vld [vmem:[%s1 + $0x834] sm:$0xff]
  %v404 = vld [vmem:[%s1 + $0x83c] sm:$0xf]
  %v405 = vld [vmem:[%s1 + $0x840] sm:$0xff]
  %v406 = vld [vmem:[%s1 + $0x848] sm:$0xf]
  %v407 = vld [vmem:[%s1 + $0x84c] sm:$0xff]
  %v408 = vld [vmem:[%s1 + $0x854] sm:$0xf]
  %v409 = vld [vmem:[%s1 + $0x858] sm:$0xff]
  %v410 = vld [vmem:[%s1 + $0x860] sm:$0xf]
  %v411 = vld [vmem:[%s1 + $0x864] sm:$0xff]
  %v412 = vld [vmem:[%s1 + $0x86c] sm:$0xf]
  %v413 = vld [vmem:[%s1 + $0x870] sm:$0xff]
  %v414 = vld [vmem:[%s1 + $0x878] sm:$0xf]
  %v415 = vld [vmem:[%s1 + $0x87c] sm:$0xff]
  %v416 = vld [vmem:[%s1 + $0x884] sm:$0xf]
  %v417 = vld [vmem:[%s1 + $0x888] sm:$0xff]
  %v418 = vld [vmem:[%s1 + $0x890] sm:$0xf]
  %v419 = vld [vmem:[%s1 + $0x894] sm:$0xff]
  %v420 = vld [vmem:[%s1 + $0x89c] sm:$0xf]
  %v421 = vld [vmem:[%s1 + $0x8a0] sm:$0xff]
  %v422 = vld [vmem:[%s1 + $0x8a8] sm:$0xf]
  %v423 = vld [vmem:[%s1 + $0x8ac] sm:$0xff]
  %v424 = vld [vmem:[%s1 + $0x8b4] sm:$0xf]
  %v425 = vld [vmem:[%s1 + $0x8b8] sm:$0xff]
  %v426 = vld [vmem:[%s1 + $0x8c0] sm:$0xf]
  %v427 = vld [vmem:[%s1 + $0x8c4] sm:$0xff]
  %v428 = vld [vmem:[%s1 + $0x8cc] sm:$0xf]
  %v429 = vld [vmem:[%s1 + $0x8d0] sm:$0xff]
  %v430 = vld [vmem:[%s1 + $0x8d8] sm:$0xf]
  %v431 = vld [vmem:[%s1 + $0x8dc] sm:$0xff]
  %v432 = vld [vmem:[%s1 + $0x8e4] sm:$0xf]
  %v433 = vld [vmem:[%s1 + $0x8e8] sm:$0xff]
  %v434 = vld [vmem:[%s1 + $0x8f0] sm:$0xf]
  %v435 = vld [vmem:[%s1 + $0x8f4] sm:$0xff]
  %v436 = vld [vmem:[%s1 + $0x8fc] sm:$0xf]
  %v437 = vld [vmem:[%s1 + $0x900] sm:$0xff]
  %v438 = vld [vmem:[%s1 + $0x908] sm:$0xf]
  %v439 = vld [vmem:[%s1 + $0x90c] sm:$0xff]
  %v440 = vld [vmem:[%s1 + $0x914] sm:$0xf]
  %v441 = vld [vmem:[%s1 + $0x918] sm:$0xff]
  %v442 = vld [vmem:[%s1 + $0x920] sm:$0xf]
  %v443 = vld [vmem:[%s1 + $0x924] sm:$0xff]
  %v444 = vld [vmem:[%s1 + $0x92c] sm:$0xf]
  %v445 = vld [vmem:[%s1 + $0x930] sm:$0xff]
  %v446 = vld [vmem:[%s1 + $0x938] sm:$0xf]
  %v447 = vld [vmem:[%s1 + $0x93c] sm:$0xff]
  %v448 = vld [vmem:[%s1 + $0x944] sm:$0xf]
  %v449 = vld [vmem:[%s1 + $0x948] sm:$0xff]
  %v450 = vld [vmem:[%s1 + $0x950] sm:$0xf]
  %v451 = vld [vmem:[%s1 + $0x954] sm:$0xff]
  %v452 = vld [vmem:[%s1 + $0x95c] sm:$0xf]
  %v453 = vld [vmem:[%s1 + $0x960] sm:$0xff]
  %v454 = vld [vmem:[%s1 + $0x968] sm:$0xf]
  %v455 = vld [vmem:[%s1 + $0x96c] sm:$0xff]
  %v456 = vld [vmem:[%s1 + $0x974] sm:$0xf]
  %v457 = vld [vmem:[%s1 + $0x978] sm:$0xff]
  %v458 = vld [vmem:[%s1 + $0x980] sm:$0xf]
  %v459 = vld [vmem:[%s1 + $0x984] sm:$0xff]
  %v460 = vld [vmem:[%s1 + $0x98c] sm:$0xf]
  %v461 = vld [vmem:[%s1 + $0x990] sm:$0xff]
  %v462 = vld [vmem:[%s1 + $0x998] sm:$0xf]
  %v463 = vld [vmem:[%s1 + $0x99c] sm:$0xff]
  %v464 = vld [vmem:[%s1 + $0x9a4] sm:$0xf]
  %v465 = vld [vmem:[%s1 + $0x9a8] sm:$0xff]
  %v466 = vld [vmem:[%s1 + $0x9b0] sm:$0xf]
  %v467 = vld [vmem:[%s1 + $0x9b4] sm:$0xff]
  %v468 = vld [vmem:[%s1 + $0x9bc] sm:$0xf]
  %v469 = vld [vmem:[%s1 + $0x9c0] sm:$0xff]
  %v470 = vld [vmem:[%s1 + $0x9c8] sm:$0xf]
  %v471 = vld [vmem:[%s1 + $0x9cc] sm:$0xff]
  %v472 = vld [vmem:[%s1 + $0x9d4] sm:$0xf]
  %v473 = vld [vmem:[%s1 + $0x9d8] sm:$0xff]
  %v474 = vld [vmem:[%s1 + $0x9e0] sm:$0xf]
  %v475 = vld [vmem:[%s1 + $0x9e4] sm:$0xff]
  %v476 = vld [vmem:[%s1 + $0x9ec] sm:$0xf]
  %v477 = vld [vmem:[%s1 + $0x9f0] sm:$0xff]
  %v478 = vld [vmem:[%s1 + $0x9f8] sm:$0xf]
  %v479 = vld [vmem:[%s1 + $0x9fc] sm:$0xff]
  %v480 = vld [vmem:[%s1 + $0xa04] sm:$0xf]
  %v481 = vld [vmem:[%s1 + $0xa08] sm:$0xff]
  %v482 = vld [vmem:[%s1 + $0xa10] sm:$0xf]
  %v483 = vld [vmem:[%s1 + $0xa14] sm:$0xff]
  %v484 = vld [vmem:[%s1 + $0xa1c] sm:$0xf]
  %v485 = vld [vmem:[%s1 + $0xa20] sm:$0xff]
  %v486 = vld [vmem:[%s1 + $0xa28] sm:$0xf]
  %v487 = vld [vmem:[%s1 + $0xa2c] sm:$0xff]
  %v488 = vld [vmem:[%s1 + $0xa34] sm:$0xf]
  %v489 = vld [vmem:[%s1 + $0xa38] sm:$0xff]
  %v490 = vld [vmem:[%s1 + $0xa40] sm:$0xf]
  %v491 = vld [vmem:[%s1 + $0xa44] sm:$0xff]
  %v492 = vld [vmem:[%s1 + $0xa4c] sm:$0xf]
  %v493 = vld [vmem:[%s1 + $0xa50] sm:$0xff]
  %v494 = vld [vmem:[%s1 + $0xa58] sm:$0xf]
  %v495 = vld [vmem:[%s1 + $0xa5c] sm:$0xff]
  %v496 = vld [vmem:[%s1 + $0xa64] sm:$0xf]
  %v497 = vld [vmem:[%s1 + $0xa68] sm:$0xff]
  %v498 = vld [vmem:[%s1 + $0xa70] sm:$0xf]
  %v499 = vld [vmem:[%s1 + $0xa74] sm:$0xff]
  %v500 = vld [vmem:[%s1 + $0xa7c] sm:$0xf]
  %v501 = vld [vmem:[%s1 + $0xa80] sm:$0xff]
  %v502 = vld [vmem:[%s1 + $0xa88] sm:$0xf]
  %v503 = vld [vmem:[%s1 + $0xa8c] sm:$0xff]
  %v504 = vld [vmem:[%s1 + $0xa94] sm:$0xf]
  %v505 = vld [vmem:[%s1 + $0xa98] sm:$0xff]
  %v506 = vld [vmem:[%s1 + $0xaa0] sm:$0xf]
  %v507 = vld [vmem:[%s1 + $0xaa4] sm:$0xff]
  %v508 = vld [vmem:[%s1 + $0xaac] sm:$0xf]
  %v509 = vld [vmem:[%s1 + $0xab0] sm:$0xff]
  %v510 = vld [vmem:[%s1 + $0xab8] sm:$0xf]
  %v511 = vld [vmem:[%s1 + $0xabc] sm:$0xff]
  %v512 = vld [vmem:[%s1 + $0xac4] sm:$0xf]
  %v513 = vld [vmem:[%s1 + $0xac8] sm:$0xff]
  %v514 = vld [vmem:[%s1 + $0xad0] sm:$0xf]
  %v515 = vld [vmem:[%s1 + $0xad4] sm:$0xff]
  %v516 = vld [vmem:[%s1 + $0xadc] sm:$0xf]
  %v517 = vld [vmem:[%s1 + $0xae0] sm:$0xff]
  %v518 = vld [vmem:[%s1 + $0xae8] sm:$0xf]
  %v519 = vld [vmem:[%s1 + $0xaec] sm:$0xff]
  %v520 = vld [vmem:[%s1 + $0xaf4] sm:$0xf]
  %v521 = vld [vmem:[%s1 + $0xaf8] sm:$0xff]
  %v522 = vld [vmem:[%s1 + $0xb00] sm:$0xf]
  %v523 = vld [vmem:[%s1 + $0xb04] sm:$0xff]
  %v524 = vld [vmem:[%s1 + $0xb0c] sm:$0xf]
  %v525 = vld [vmem:[%s1 + $0xb10] sm:$0xff]
  %v526 = vld [vmem:[%s1 + $0xb18] sm:$0xf]
  %v527 = vld [vmem:[%s1 + $0xb1c] sm:$0xff]
  %v528 = vld [vmem:[%s1 + $0xb24] sm:$0xf]
  %v529 = vld [vmem:[%s1 + $0xb28] sm:$0xff]
  %v530 = vld [vmem:[%s1 + $0xb30] sm:$0xf]
  %v531 = vld [vmem:[%s1 + $0xb34] sm:$0xff]
  %v532 = vld [vmem:[%s1 + $0xb3c] sm:$0xf]
  %v533 = vld [vmem:[%s1 + $0xb40] sm:$0xff]
  %v534 = vld [vmem:[%s1 + $0xb48] sm:$0xf]
  %v535 = vld [vmem:[%s1 + $0xb4c] sm:$0xff]
  %v536 = vld [vmem:[%s1 + $0xb54] sm:$0xf]
  %v537 = vld [vmem:[%s1 + $0xb58] sm:$0xff]
  %v538 = vld [vmem:[%s1 + $0xb60] sm:$0xf]
  %v539 = vld [vmem:[%s1 + $0xb64] sm:$0xff]
  %v540 = vld [vmem:[%s1 + $0xb6c] sm:$0xf]
  %v541 = vld [vmem:[%s1 + $0xb70] sm:$0xff]
  %v542 = vld [vmem:[%s1 + $0xb78] sm:$0xf]
  %v543 = vld [vmem:[%s1 + $0xb7c] sm:$0xff]
  %v544 = vld [vmem:[%s1 + $0xb84] sm:$0xf]
  %v545 = vld [vmem:[%s1 + $0xb88] sm:$0xff]
  %v546 = vld [vmem:[%s1 + $0xb90] sm:$0xf]
  %v547 = vld [vmem:[%s1 + $0xb94] sm:$0xff]
  %v548 = vld [vmem:[%s1 + $0xb9c] sm:$0xf]
  %v549 = vld [vmem:[%s1 + $0xba0] sm:$0xff]
  %v550 = vld [vmem:[%s1 + $0xba8] sm:$0xf]
  %v551 = vld [vmem:[%s1 + $0xbac] sm:$0xff]
  %v552 = vld [vmem:[%s1 + $0xbb4] sm:$0xf]
  %v553 = vld [vmem:[%s1 + $0xbb8] sm:$0xff]
  %v554 = vld [vmem:[%s1 + $0xbc0] sm:$0xf]
  %v555 = vld [vmem:[%s1 + $0xbc4] sm:$0xff]
  %v556 = vld [vmem:[%s1 + $0xbcc] sm:$0xf]
  %v557 = vld [vmem:[%s1 + $0xbd0] sm:$0xff]
  %v558 = vld [vmem:[%s1 + $0xbd8] sm:$0xf]
  %v559 = vld [vmem:[%s1 + $0xbdc] sm:$0xff]
  %v560 = vld [vmem:[%s1 + $0xbe4] sm:$0xf]
  %v561 = vld [vmem:[%s1 + $0xbe8] sm:$0xff]
  %v562 = vld [vmem:[%s1 + $0xbf0] sm:$0xf]
  %v563 = vld [vmem:[%s1 + $0xbf4] sm:$0xff]
  %v564 = vld [vmem:[%s1 + $0xbfc] sm:$0xf]
  %v565 = vld [vmem:[%s1 + $0xc00] sm:$0xff]
  %v566 = vld [vmem:[%s1 + $0xc08] sm:$0xf]
  %v567 = vld [vmem:[%s1 + $0xc0c] sm:$0xff]
  %v568 = vld [vmem:[%s1 + $0xc14] sm:$0xf]
  %v569 = vld [vmem:[%s1 + $0xc18] sm:$0xff]
  %v570 = vld [vmem:[%s1 + $0xc20] sm:$0xf]
  %v571 = vld [vmem:[%s1 + $0xc24] sm:$0xff]
  %v572 = vld [vmem:[%s1 + $0xc2c] sm:$0xf]
  %v573 = vld [vmem:[%s1 + $0xc30] sm:$0xff]
  %v574 = vld [vmem:[%s1 + $0xc38] sm:$0xf]
  %v575 = vld [vmem:[%s1 + $0xc3c] sm:$0xff]
  %v576 = vld [vmem:[%s1 + $0xc44] sm:$0xf]
  %v577 = vld [vmem:[%s1 + $0xc48] sm:$0xff]
  %v578 = vld [vmem:[%s1 + $0xc50] sm:$0xf]
  %v579 = vld [vmem:[%s1 + $0xc54] sm:$0xff]
  %v580 = vld [vmem:[%s1 + $0xc5c] sm:$0xf]
  %v581 = vld [vmem:[%s1 + $0xc60] sm:$0xff]
  %v582 = vld [vmem:[%s1 + $0xc68] sm:$0xf]
  %v583 = vld [vmem:[%s1 + $0xc6c] sm:$0xff]
  %v584 = vld [vmem:[%s1 + $0xc74] sm:$0xf]
  %v585 = vld [vmem:[%s1 + $0xc78] sm:$0xff]
  %v586 = vld [vmem:[%s1 + $0xc80] sm:$0xf]
  %v587 = vld [vmem:[%s1 + $0xc84] sm:$0xff]
  %v588 = vld [vmem:[%s1 + $0xc8c] sm:$0xf]
  %v589 = vld [vmem:[%s1 + $0xc90] sm:$0xff]
  %v590 = vld [vmem:[%s1 + $0xc98] sm:$0xf]
  %v591 = vld [vmem:[%s1 + $0xc9c] sm:$0xff]
  %v592 = vld [vmem:[%s1 + $0xca4] sm:$0xf]
  %v593 = vld [vmem:[%s1 + $0xca8] sm:$0xff]
  %v594 = vld [vmem:[%s1 + $0xcb0] sm:$0xf]
  %v595 = vld [vmem:[%s1 + $0xcb4] sm:$0xff]
  %v596 = vld [vmem:[%s1 + $0xcbc] sm:$0xf]
  %v597 = vld [vmem:[%s1 + $0xcc0] sm:$0xff]
  %v598 = vld [vmem:[%s1 + $0xcc8] sm:$0xf]
  %v599 = vld [vmem:[%s1 + $0xccc] sm:$0xff]
  %v600 = vld [vmem:[%s1 + $0xcd4] sm:$0xf]
  %v601 = vld [vmem:[%s1 + $0xcd8] sm:$0xff]
  %v602 = vld [vmem:[%s1 + $0xce0] sm:$0xf]
  %v603 = vld [vmem:[%s1 + $0xce4] sm:$0xff]
  %v604 = vld [vmem:[%s1 + $0xcec] sm:$0xf]
  %v605 = vld [vmem:[%s1 + $0xcf0] sm:$0xff]
  %v606 = vld [vmem:[%s1 + $0xcf8] sm:$0xf]
  %v607 = vld [vmem:[%s1 + $0xcfc] sm:$0xff]
  %v608 = vld [vmem:[%s1 + $0xd04] sm:$0xf]
  %v609 = vld [vmem:[%s1 + $0xd08] sm:$0xff]
  %v610 = vld [vmem:[%s1 + $0xd10] sm:$0xf]
  %v611 = vld [vmem:[%s1 + $0xd14] sm:$0xff]
  %v612 = vld [vmem:[%s1 + $0xd1c] sm:$0xf]
  %v613 = vld [vmem:[%s1 + $0xd20] sm:$0xff]
  %v614 = vld [vmem:[%s1 + $0xd28] sm:$0xf]
  %v615 = vld [vmem:[%s1 + $0xd2c] sm:$0xff]
  %v616 = vld [vmem:[%s1 + $0xd34] sm:$0xf]
  %v617 = vld [vmem:[%s1 + $0xd38] sm:$0xff]
  %v618 = vld [vmem:[%s1 + $0xd40] sm:$0xf]
  %v619 = vld [vmem:[%s1 + $0xd44] sm:$0xff]
  %v620 = vld [vmem:[%s1 + $0xd4c] sm:$0xf]
  %v621 = vld [vmem:[%s1 + $0xd50] sm:$0xff]
  %v622 = vld [vmem:[%s1 + $0xd58] sm:$0xf]
  %v623 = vld [vmem:[%s1 + $0xd5c] sm:$0xff]
  %v624 = vld [vmem:[%s1 + $0xd64] sm:$0xf]
  %v625 = vld [vmem:[%s1 + $0xd68] sm:$0xff]
  %v626 = vld [vmem:[%s1 + $0xd70] sm:$0xf]
  %v627 = vld [vmem:[%s1 + $0xd74] sm:$0xff]
  %v628 = vld [vmem:[%s1 + $0xd7c] sm:$0xf]
  %v629 = vld [vmem:[%s2] sm:$0x7]
  %v631 = vperm.slane %v629, 0
  %v632 = vperm.slane %v629, 1
  %v633 = vperm.slane %v629, 2
  %v664 = vunpack.c.l.b16 %v26
  %v665 = vunpack.c.h.b16 %v26
  %v666 = vunpack.c.l.b16 %v27
  %v667 = vunpack.c.h.b16 %v27
  %v668 = vunpack.c.l.b16 %v28
  %v669 = vunpack.c.h.b16 %v28
  %v670 = vunpack.c.l.b16 %v29
  %v671 = vunpack.c.h.b16 %v29
  %v672 = vunpack.c.l.b16 %v30
  %v673 = vunpack.c.h.b16 %v30
  %v674 = vunpack.c.l.b16 %v31
  %v675 = vunpack.c.h.b16 %v31
  %v676 = vunpack.c.l.b16 %v32
  %v677 = vunpack.c.h.b16 %v32
  %v678 = vunpack.c.l.b16 %v33
  %v679 = vunpack.c.h.b16 %v33
  %v680 = vunpack.c.l.b16 %v34
  %v681 = vunpack.c.h.b16 %v34
  %v682 = vunpack.c.l.b16 %v35
  %v683 = vunpack.c.h.b16 %v35
  %v684 = vunpack.c.l.b16 %v36
  %v685 = vunpack.c.h.b16 %v36
  %v686 = vunpack.c.l.b16 %v37
  %v687 = vunpack.c.h.b16 %v37
  %v688 = vunpack.c.l.b16 %v38
  %v689 = vunpack.c.h.b16 %v38
  %v690 = vunpack.c.l.b16 %v39
  %v691 = vunpack.c.h.b16 %v39
  %v692 = vunpack.c.l.b16 %v40
  %v693 = vunpack.c.h.b16 %v40
  %v694 = vunpack.c.l.b16 %v41
  %v695 = vunpack.c.h.b16 %v41
  %v696 = vunpack.c.l.b16 %v42
  %v697 = vunpack.c.h.b16 %v42
  %v698 = vunpack.c.l.b16 %v43
  %v699 = vunpack.c.h.b16 %v43
  %v700 = vunpack.c.l.b16 %v44
  %v701 = vunpack.c.h.b16 %v44
  %v702 = vunpack.c.l.b16 %v45
  %v703 = vunpack.c.h.b16 %v45
  %v704 = vunpack.c.l.b16 %v46
  %v705 = vunpack.c.h.b16 %v46
  %v706 = vunpack.c.l.b16 %v47
  %v707 = vunpack.c.h.b16 %v47
  %v708 = vunpack.c.l.b16 %v48
  %v709 = vunpack.c.h.b16 %v48
  %v710 = vunpack.c.l.b16 %v49
  %v711 = vunpack.c.h.b16 %v49
  %v712 = vunpack.c.l.b16 %v50
  %v713 = vunpack.c.h.b16 %v50
  %v714 = vunpack.c.l.b16 %v51
  %v715 = vunpack.c.h.b16 %v51
  %v716 = vunpack.c.l.b16 %v52
  %v717 = vunpack.c.h.b16 %v52
  %v718 = vpack.c.b16 %v682, %v664
  %v719 = vpack.c.b16 %v683, %v665
  %v720 = vpack.c.b16 %v684, %v666
  %v721 = vpack.c.b16 %v685, %v667
  %v722 = vpack.c.b16 %v686, %v668
  %v723 = vpack.c.b16 %v687, %v669
  %v724 = vpack.c.b16 %v688, %v670
  %v725 = vpack.c.b16 %v689, %v671
  %v726 = vpack.c.b16 %v690, %v672
  %v727 = vpack.c.b16 %v691, %v673
  %v728 = vpack.c.b16 %v692, %v674
  %v729 = vpack.c.b16 %v693, %v675
  %v730 = vpack.c.b16 %v694, %v676
  %v731 = vpack.c.b16 %v695, %v677
  %v732 = vpack.c.b16 %v696, %v678
  %v733 = vpack.c.b16 %v697, %v679
  %v734 = vpack.c.b16 %v698, %v680
  %v735 = vpack.c.b16 %v699, %v681
  %v736 = vpack.c.b16 %v700, %v700
  %v737 = vpack.c.b16 %v701, %v701
  %v738 = vpack.c.b16 %v702, %v702
  %v739 = vpack.c.b16 %v703, %v703
  %v740 = vpack.c.b16 %v704, %v704
  %v741 = vpack.c.b16 %v705, %v705
  %v742 = vpack.c.b16 %v706, %v706
  %v743 = vpack.c.b16 %v707, %v707
  %v744 = vpack.c.b16 %v708, %v708
  %v745 = vpack.c.b16 %v709, %v709
  %v746 = vpack.c.b16 %v710, %v710
  %v747 = vpack.c.b16 %v711, %v711
  %v748 = vpack.c.b16 %v712, %v712
  %v749 = vpack.c.b16 %v713, %v713
  %v750 = vpack.c.b16 %v714, %v714
  %v751 = vpack.c.b16 %v715, %v715
  %v752 = vpack.c.b16 %v716, %v716
  %v753 = vpack.c.b16 %v717, %v717
  %v1366 = vunpack.c.l.b16 %v53
  %v1367 = vunpack.c.h.b16 %v53
  %v1368 = vunpack.c.l.b16 %v54
  %v1369 = vunpack.c.l.b16 %v55
  %v1370 = vunpack.c.h.b16 %v55
  %v1371 = vunpack.c.l.b16 %v56
  %v1372 = vunpack.c.l.b16 %v57
  %v1373 = vunpack.c.h.b16 %v57
  %v1374 = vunpack.c.l.b16 %v58
  %v1375 = vunpack.c.l.b16 %v59
  %v1376 = vunpack.c.h.b16 %v59
  %v1377 = vunpack.c.l.b16 %v60
  %v1378 = vunpack.c.l.b16 %v61
  %v1379 = vunpack.c.h.b16 %v61
  %v1380 = vunpack.c.l.b16 %v62
  %v1381 = vunpack.c.l.b16 %v63
  %v1382 = vunpack.c.h.b16 %v63
  %v1383 = vunpack.c.l.b16 %v64
  %v1384 = vunpack.c.l.b16 %v65
  %v1385 = vunpack.c.h.b16 %v65
  %v1386 = vunpack.c.l.b16 %v66
  %v1387 = vunpack.c.l.b16 %v67
  %v1388 = vunpack.c.h.b16 %v67
  %v1389 = vunpack.c.l.b16 %v68
  %v1390 = vunpack.c.l.b16 %v69
  %v1391 = vunpack.c.h.b16 %v69
  %v1392 = vunpack.c.l.b16 %v70
  %v1393 = vunpack.c.l.b16 %v71
  %v1394 = vunpack.c.h.b16 %v71
  %v1395 = vunpack.c.l.b16 %v72
  %v1396 = vunpack.c.l.b16 %v73
  %v1397 = vunpack.c.h.b16 %v73
  %v1398 = vunpack.c.l.b16 %v74
  %v1399 = vunpack.c.l.b16 %v75
  %v1400 = vunpack.c.h.b16 %v75
  %v1401 = vunpack.c.l.b16 %v76
  %v1402 = vunpack.c.l.b16 %v77
  %v1403 = vunpack.c.h.b16 %v77
  %v1404 = vunpack.c.l.b16 %v78
  %v1405 = vunpack.c.l.b16 %v79
  %v1406 = vunpack.c.h.b16 %v79
  %v1407 = vunpack.c.l.b16 %v80
  %v1408 = vunpack.c.l.b16 %v81
  %v1409 = vunpack.c.h.b16 %v81
  %v1410 = vunpack.c.l.b16 %v82
  %v1411 = vunpack.c.l.b16 %v83
  %v1412 = vunpack.c.h.b16 %v83
  %v1413 = vunpack.c.l.b16 %v84
  %v1414 = vunpack.c.l.b16 %v85
  %v1415 = vunpack.c.h.b16 %v85
  %v1416 = vunpack.c.l.b16 %v86
  %v1417 = vunpack.c.l.b16 %v87
  %v1418 = vunpack.c.h.b16 %v87
  %v1419 = vunpack.c.l.b16 %v88
  %v1420 = vunpack.c.l.b16 %v89
  %v1421 = vunpack.c.h.b16 %v89
  %v1422 = vunpack.c.l.b16 %v90
  %v1423 = vunpack.c.l.b16 %v91
  %v1424 = vunpack.c.h.b16 %v91
  %v1425 = vunpack.c.l.b16 %v92
  %v1426 = vunpack.c.l.b16 %v93
  %v1427 = vunpack.c.h.b16 %v93
  %v1428 = vunpack.c.l.b16 %v94
  %v1429 = vunpack.c.l.b16 %v95
  %v1430 = vunpack.c.h.b16 %v95
  %v1431 = vunpack.c.l.b16 %v96
  %v1432 = vunpack.c.l.b16 %v97
  %v1433 = vunpack.c.h.b16 %v97
  %v1434 = vunpack.c.l.b16 %v98
  %v1435 = vunpack.c.l.b16 %v99
  %v1436 = vunpack.c.h.b16 %v99
  %v1437 = vunpack.c.l.b16 %v100
  %v1438 = vunpack.c.l.b16 %v101
  %v1439 = vunpack.c.h.b16 %v101
  %v1440 = vunpack.c.l.b16 %v102
  %v1441 = vunpack.c.l.b16 %v103
  %v1442 = vunpack.c.h.b16 %v103
  %v1443 = vunpack.c.l.b16 %v104
  %v1444 = vunpack.c.l.b16 %v105
  %v1445 = vunpack.c.h.b16 %v105
  %v1446 = vunpack.c.l.b16 %v106
  %v1447 = vunpack.c.l.b16 %v107
  %v1448 = vunpack.c.h.b16 %v107
  %v1449 = vunpack.c.l.b16 %v108
  %v1450 = vunpack.c.l.b16 %v109
  %v1451 = vunpack.c.h.b16 %v109
  %v1452 = vunpack.c.l.b16 %v110
  %v1453 = vunpack.c.l.b16 %v111
  %v1454 = vunpack.c.h.b16 %v111
  %v1455 = vunpack.c.l.b16 %v112
  %v1456 = vunpack.c.l.b16 %v113
  %v1457 = vunpack.c.h.b16 %v113
  %v1458 = vunpack.c.l.b16 %v114
  %v1459 = vunpack.c.l.b16 %v115
  %v1460 = vunpack.c.h.b16 %v115
  %v1461 = vunpack.c.l.b16 %v116
  %v1462 = vunpack.c.l.b16 %v117
  %v1463 = vunpack.c.h.b16 %v117
  %v1464 = vunpack.c.l.b16 %v118
  %v1465 = vunpack.c.l.b16 %v119
  %v1466 = vunpack.c.h.b16 %v119
  %v1467 = vunpack.c.l.b16 %v120
  %v1468 = vunpack.c.l.b16 %v121
  %v1469 = vunpack.c.h.b16 %v121
  %v1470 = vunpack.c.l.b16 %v122
  %v1471 = vunpack.c.l.b16 %v123
  %v1472 = vunpack.c.h.b16 %v123
  %v1473 = vunpack.c.l.b16 %v124
  %v1474 = vunpack.c.l.b16 %v125
  %v1475 = vunpack.c.h.b16 %v125
  %v1476 = vunpack.c.l.b16 %v126
  %v1477 = vunpack.c.l.b16 %v127
  %v1478 = vunpack.c.h.b16 %v127
  %v1479 = vunpack.c.l.b16 %v128
  %v1480 = vunpack.c.l.b16 %v129
  %v1481 = vunpack.c.h.b16 %v129
  %v1482 = vunpack.c.l.b16 %v130
  %v1483 = vunpack.c.l.b16 %v131
  %v1484 = vunpack.c.h.b16 %v131
  %v1485 = vunpack.c.l.b16 %v132
  %v1486 = vunpack.c.l.b16 %v133
  %v1487 = vunpack.c.h.b16 %v133
  %v1488 = vunpack.c.l.b16 %v134
  %v1489 = vunpack.c.l.b16 %v135
  %v1490 = vunpack.c.h.b16 %v135
  %v1491 = vunpack.c.l.b16 %v136
  %v1492 = vunpack.c.l.b16 %v137
  %v1493 = vunpack.c.h.b16 %v137
  %v1494 = vunpack.c.l.b16 %v138
  %v1495 = vunpack.c.l.b16 %v139
  %v1496 = vunpack.c.h.b16 %v139
  %v1497 = vunpack.c.l.b16 %v140
  %v1498 = vunpack.c.l.b16 %v141
  %v1499 = vunpack.c.h.b16 %v141
  %v1500 = vunpack.c.l.b16 %v142
  %v1501 = vunpack.c.l.b16 %v143
  %v1502 = vunpack.c.h.b16 %v143
  %v1503 = vunpack.c.l.b16 %v144
  %v1504 = vunpack.c.l.b16 %v145
  %v1505 = vunpack.c.h.b16 %v145
  %v1506 = vunpack.c.l.b16 %v146
  %v1507 = vunpack.c.l.b16 %v147
  %v1508 = vunpack.c.h.b16 %v147
  %v1509 = vunpack.c.l.b16 %v148
  %v1510 = vunpack.c.l.b16 %v149
  %v1511 = vunpack.c.h.b16 %v149
  %v1512 = vunpack.c.l.b16 %v150
  %v1513 = vunpack.c.l.b16 %v151
  %v1514 = vunpack.c.h.b16 %v151
  %v1515 = vunpack.c.l.b16 %v152
  %v1516 = vunpack.c.l.b16 %v153
  %v1517 = vunpack.c.h.b16 %v153
  %v1518 = vunpack.c.l.b16 %v154
  %v1519 = vunpack.c.l.b16 %v155
  %v1520 = vunpack.c.h.b16 %v155
  %v1521 = vunpack.c.l.b16 %v156
  %v1522 = vunpack.c.l.b16 %v157
  %v1523 = vunpack.c.h.b16 %v157
  %v1524 = vunpack.c.l.b16 %v158
  %v1525 = vunpack.c.l.b16 %v159
  %v1526 = vunpack.c.h.b16 %v159
  %v1527 = vunpack.c.l.b16 %v160
  %v1528 = vunpack.c.l.b16 %v161
  %v1529 = vunpack.c.h.b16 %v161
  %v1530 = vunpack.c.l.b16 %v162
  %v1531 = vunpack.c.l.b16 %v163
  %v1532 = vunpack.c.h.b16 %v163
  %v1533 = vunpack.c.l.b16 %v164
  %v1534 = vunpack.c.l.b16 %v165
  %v1535 = vunpack.c.h.b16 %v165
  %v1536 = vunpack.c.l.b16 %v166
  %v1537 = vunpack.c.l.b16 %v167
  %v1538 = vunpack.c.h.b16 %v167
  %v1539 = vunpack.c.l.b16 %v168
  %v1540 = vunpack.c.l.b16 %v169
  %v1541 = vunpack.c.h.b16 %v169
  %v1542 = vunpack.c.l.b16 %v170
  %v1543 = vunpack.c.l.b16 %v171
  %v1544 = vunpack.c.h.b16 %v171
  %v1545 = vunpack.c.l.b16 %v172
  %v1546 = vunpack.c.l.b16 %v173
  %v1547 = vunpack.c.h.b16 %v173
  %v1548 = vunpack.c.l.b16 %v174
  %v1549 = vunpack.c.l.b16 %v175
  %v1550 = vunpack.c.h.b16 %v175
  %v1551 = vunpack.c.l.b16 %v176
  %v1552 = vunpack.c.l.b16 %v177
  %v1553 = vunpack.c.h.b16 %v177
  %v1554 = vunpack.c.l.b16 %v178
  %v1555 = vunpack.c.l.b16 %v179
  %v1556 = vunpack.c.h.b16 %v179
  %v1557 = vunpack.c.l.b16 %v180
  %v1558 = vunpack.c.l.b16 %v181
  %v1559 = vunpack.c.h.b16 %v181
  %v1560 = vunpack.c.l.b16 %v182
  %v1561 = vunpack.c.l.b16 %v183
  %v1562 = vunpack.c.h.b16 %v183
  %v1563 = vunpack.c.l.b16 %v184
  %v1564 = vunpack.c.l.b16 %v185
  %v1565 = vunpack.c.h.b16 %v185
  %v1566 = vunpack.c.l.b16 %v186
  %v1567 = vunpack.c.l.b16 %v187
  %v1568 = vunpack.c.h.b16 %v187
  %v1569 = vunpack.c.l.b16 %v188
  %v1570 = vunpack.c.l.b16 %v189
  %v1571 = vunpack.c.h.b16 %v189
  %v1572 = vunpack.c.l.b16 %v190
  %v1573 = vunpack.c.l.b16 %v191
  %v1574 = vunpack.c.h.b16 %v191
  %v1575 = vunpack.c.l.b16 %v192
  %v1576 = vunpack.c.l.b16 %v193
  %v1577 = vunpack.c.h.b16 %v193
  %v1578 = vunpack.c.l.b16 %v194
  %v1579 = vunpack.c.l.b16 %v195
  %v1580 = vunpack.c.h.b16 %v195
  %v1581 = vunpack.c.l.b16 %v196
  %v1582 = vunpack.c.l.b16 %v197
  %v1583 = vunpack.c.h.b16 %v197
  %v1584 = vunpack.c.l.b16 %v198
  %v1585 = vunpack.c.l.b16 %v199
  %v1586 = vunpack.c.h.b16 %v199
  %v1587 = vunpack.c.l.b16 %v200
  %v1588 = vunpack.c.l.b16 %v201
  %v1589 = vunpack.c.h.b16 %v201
  %v1590 = vunpack.c.l.b16 %v202
  %v1591 = vunpack.c.l.b16 %v203
  %v1592 = vunpack.c.h.b16 %v203
  %v1593 = vunpack.c.l.b16 %v204
  %v1594 = vunpack.c.l.b16 %v205
  %v1595 = vunpack.c.h.b16 %v205
  %v1596 = vunpack.c.l.b16 %v206
  %v1597 = vunpack.c.l.b16 %v207
  %v1598 = vunpack.c.h.b16 %v207
  %v1599 = vunpack.c.l.b16 %v208
  %v1600 = vunpack.c.l.b16 %v209
  %v1601 = vunpack.c.h.b16 %v209
  %v1602 = vunpack.c.l.b16 %v210
  %v1603 = vunpack.c.l.b16 %v211
  %v1604 = vunpack.c.h.b16 %v211
  %v1605 = vunpack.c.l.b16 %v212
  %v1606 = vunpack.c.l.b16 %v213
  %v1607 = vunpack.c.h.b16 %v213
  %v1608 = vunpack.c.l.b16 %v214
  %v1609 = vunpack.c.l.b16 %v215
  %v1610 = vunpack.c.h.b16 %v215
  %v1611 = vunpack.c.l.b16 %v216
  %v1612 = vunpack.c.l.b16 %v217
  %v1613 = vunpack.c.h.b16 %v217
  %v1614 = vunpack.c.l.b16 %v218
  %v1615 = vunpack.c.l.b16 %v219
  %v1616 = vunpack.c.h.b16 %v219
  %v1617 = vunpack.c.l.b16 %v220
  %v1618 = vunpack.c.l.b16 %v221
  %v1619 = vunpack.c.h.b16 %v221
  %v1620 = vunpack.c.l.b16 %v222
  %v1621 = vunpack.c.l.b16 %v223
  %v1622 = vunpack.c.h.b16 %v223
  %v1623 = vunpack.c.l.b16 %v224
  %v1624 = vunpack.c.l.b16 %v225
  %v1625 = vunpack.c.h.b16 %v225
  %v1626 = vunpack.c.l.b16 %v226
  %v1627 = vunpack.c.l.b16 %v227
  %v1628 = vunpack.c.h.b16 %v227
  %v1629 = vunpack.c.l.b16 %v228
  %v1630 = vunpack.c.l.b16 %v229
  %v1631 = vunpack.c.h.b16 %v229
  %v1632 = vunpack.c.l.b16 %v230
  %v1633 = vunpack.c.l.b16 %v231
  %v1634 = vunpack.c.h.b16 %v231
  %v1635 = vunpack.c.l.b16 %v232
  %v1636 = vunpack.c.l.b16 %v233
  %v1637 = vunpack.c.h.b16 %v233
  %v1638 = vunpack.c.l.b16 %v234
  %v1639 = vunpack.c.l.b16 %v235
  %v1640 = vunpack.c.h.b16 %v235
  %v1641 = vunpack.c.l.b16 %v236
  %v1642 = vunpack.c.l.b16 %v237
  %v1643 = vunpack.c.h.b16 %v237
  %v1644 = vunpack.c.l.b16 %v238
  %v1645 = vunpack.c.l.b16 %v239
  %v1646 = vunpack.c.h.b16 %v239
  %v1647 = vunpack.c.l.b16 %v240
  %v1648 = vunpack.c.l.b16 %v241
  %v1649 = vunpack.c.h.b16 %v241
  %v1650 = vunpack.c.l.b16 %v242
  %v1651 = vunpack.c.l.b16 %v243
  %v1652 = vunpack.c.h.b16 %v243
  %v1653 = vunpack.c.l.b16 %v244
  %v1654 = vunpack.c.l.b16 %v245
  %v1655 = vunpack.c.h.b16 %v245
  %v1656 = vunpack.c.l.b16 %v246
  %v1657 = vunpack.c.l.b16 %v247
  %v1658 = vunpack.c.h.b16 %v247
  %v1659 = vunpack.c.l.b16 %v248
  %v1660 = vunpack.c.l.b16 %v249
  %v1661 = vunpack.c.h.b16 %v249
  %v1662 = vunpack.c.l.b16 %v250
  %v1663 = vunpack.c.l.b16 %v251
  %v1664 = vunpack.c.h.b16 %v251
  %v1665 = vunpack.c.l.b16 %v252
  %v1666 = vunpack.c.l.b16 %v253
  %v1667 = vunpack.c.h.b16 %v253
  %v1668 = vunpack.c.l.b16 %v254
  %v1669 = vunpack.c.l.b16 %v255
  %v1670 = vunpack.c.h.b16 %v255
  %v1671 = vunpack.c.l.b16 %v256
  %v1672 = vunpack.c.l.b16 %v257
  %v1673 = vunpack.c.h.b16 %v257
  %v1674 = vunpack.c.l.b16 %v258
  %v1675 = vunpack.c.l.b16 %v259
  %v1676 = vunpack.c.h.b16 %v259
  %v1677 = vunpack.c.l.b16 %v260
  %v1678 = vunpack.c.l.b16 %v261
  %v1679 = vunpack.c.h.b16 %v261
  %v1680 = vunpack.c.l.b16 %v262
  %v1681 = vunpack.c.l.b16 %v263
  %v1682 = vunpack.c.h.b16 %v263
  %v1683 = vunpack.c.l.b16 %v264
  %v1684 = vunpack.c.l.b16 %v265
  %v1685 = vunpack.c.h.b16 %v265
  %v1686 = vunpack.c.l.b16 %v266
  %v1687 = vunpack.c.l.b16 %v267
  %v1688 = vunpack.c.h.b16 %v267
  %v1689 = vunpack.c.l.b16 %v268
  %v1690 = vunpack.c.l.b16 %v269
  %v1691 = vunpack.c.h.b16 %v269
  %v1692 = vunpack.c.l.b16 %v270
  %v1693 = vunpack.c.l.b16 %v271
  %v1694 = vunpack.c.h.b16 %v271
  %v1695 = vunpack.c.l.b16 %v272
  %v1696 = vunpack.c.l.b16 %v273
  %v1697 = vunpack.c.h.b16 %v273
  %v1698 = vunpack.c.l.b16 %v274
  %v1699 = vunpack.c.l.b16 %v275
  %v1700 = vunpack.c.h.b16 %v275
  %v1701 = vunpack.c.l.b16 %v276
  %v1702 = vunpack.c.l.b16 %v277
  %v1703 = vunpack.c.h.b16 %v277
  %v1704 = vunpack.c.l.b16 %v278
  %v1705 = vunpack.c.l.b16 %v279
  %v1706 = vunpack.c.h.b16 %v279
  %v1707 = vunpack.c.l.b16 %v280
  %v1708 = vunpack.c.l.b16 %v281
  %v1709 = vunpack.c.h.b16 %v281
  %v1710 = vunpack.c.l.b16 %v282
  %v1711 = vunpack.c.l.b16 %v283
  %v1712 = vunpack.c.h.b16 %v283
  %v1713 = vunpack.c.l.b16 %v284
  %v1714 = vunpack.c.l.b16 %v285
  %v1715 = vunpack.c.h.b16 %v285
  %v1716 = vunpack.c.l.b16 %v286
  %v1717 = vunpack.c.l.b16 %v287
  %v1718 = vunpack.c.h.b16 %v287
  %v1719 = vunpack.c.l.b16 %v288
  %v1720 = vunpack.c.l.b16 %v289
  %v1721 = vunpack.c.h.b16 %v289
  %v1722 = vunpack.c.l.b16 %v290
  %v1723 = vunpack.c.l.b16 %v291
  %v1724 = vunpack.c.h.b16 %v291
  %v1725 = vunpack.c.l.b16 %v292
  %v1726 = vunpack.c.l.b16 %v293
  %v1727 = vunpack.c.h.b16 %v293
  %v1728 = vunpack.c.l.b16 %v294
  %v1729 = vunpack.c.l.b16 %v295
  %v1730 = vunpack.c.h.b16 %v295
  %v1731 = vunpack.c.l.b16 %v296
  %v1732 = vunpack.c.l.b16 %v297
  %v1733 = vunpack.c.h.b16 %v297
  %v1734 = vunpack.c.l.b16 %v298
  %v1735 = vunpack.c.l.b16 %v299
  %v1736 = vunpack.c.h.b16 %v299
  %v1737 = vunpack.c.l.b16 %v300
  %v1738 = vunpack.c.l.b16 %v301
  %v1739 = vunpack.c.h.b16 %v301
  %v1740 = vunpack.c.l.b16 %v302
  %v1741 = vunpack.c.l.b16 %v303
  %v1742 = vunpack.c.h.b16 %v303
  %v1743 = vunpack.c.l.b16 %v304
  %v1744 = vunpack.c.l.b16 %v305
  %v1745 = vunpack.c.h.b16 %v305
  %v1746 = vunpack.c.l.b16 %v306
  %v1747 = vunpack.c.l.b16 %v307
  %v1748 = vunpack.c.h.b16 %v307
  %v1749 = vunpack.c.l.b16 %v308
  %v1750 = vunpack.c.l.b16 %v309
  %v1751 = vunpack.c.h.b16 %v309
  %v1752 = vunpack.c.l.b16 %v310
  %v1753 = vunpack.c.l.b16 %v311
  %v1754 = vunpack.c.h.b16 %v311
  %v1755 = vunpack.c.l.b16 %v312
  %v1756 = vunpack.c.l.b16 %v313
  %v1757 = vunpack.c.h.b16 %v313
  %v1758 = vunpack.c.l.b16 %v314
  %v1759 = vunpack.c.l.b16 %v315
  %v1760 = vunpack.c.h.b16 %v315
  %v1761 = vunpack.c.l.b16 %v316
  %v1762 = vunpack.c.l.b16 %v317
  %v1763 = vunpack.c.h.b16 %v317
  %v1764 = vunpack.c.l.b16 %v318
  %v1765 = vunpack.c.l.b16 %v319
  %v1766 = vunpack.c.h.b16 %v319
  %v1767 = vunpack.c.l.b16 %v320
  %v1768 = vunpack.c.l.b16 %v321
  %v1769 = vunpack.c.h.b16 %v321
  %v1770 = vunpack.c.l.b16 %v322
  %v1771 = vunpack.c.l.b16 %v323
  %v1772 = vunpack.c.h.b16 %v323
  %v1773 = vunpack.c.l.b16 %v324
  %v1774 = vunpack.c.l.b16 %v325
  %v1775 = vunpack.c.h.b16 %v325
  %v1776 = vunpack.c.l.b16 %v326
  %v1777 = vunpack.c.l.b16 %v327
  %v1778 = vunpack.c.h.b16 %v327
  %v1779 = vunpack.c.l.b16 %v328
  %v1780 = vunpack.c.l.b16 %v329
  %v1781 = vunpack.c.h.b16 %v329
  %v1782 = vunpack.c.l.b16 %v330
  %v1783 = vunpack.c.l.b16 %v331
  %v1784 = vunpack.c.h.b16 %v331
  %v1785 = vunpack.c.l.b16 %v332
  %v1786 = vunpack.c.l.b16 %v333
  %v1787 = vunpack.c.h.b16 %v333
  %v1788 = vunpack.c.l.b16 %v334
  %v1789 = vunpack.c.l.b16 %v335
  %v1790 = vunpack.c.h.b16 %v335
  %v1791 = vunpack.c.l.b16 %v336
  %v1792 = vunpack.c.l.b16 %v337
  %v1793 = vunpack.c.h.b16 %v337
  %v1794 = vunpack.c.l.b16 %v338
  %v1795 = vunpack.c.l.b16 %v339
  %v1796 = vunpack.c.h.b16 %v339
  %v1797 = vunpack.c.l.b16 %v340
  %v1798 = vunpack.c.l.b16 %v341
  %v1799 = vunpack.c.h.b16 %v341
  %v1800 = vunpack.c.l.b16 %v342
  %v1801 = vunpack.c.l.b16 %v343
  %v1802 = vunpack.c.h.b16 %v343
  %v1803 = vunpack.c.l.b16 %v344
  %v1804 = vunpack.c.l.b16 %v345
  %v1805 = vunpack.c.h.b16 %v345
  %v1806 = vunpack.c.l.b16 %v346
  %v1807 = vunpack.c.l.b16 %v347
  %v1808 = vunpack.c.h.b16 %v347
  %v1809 = vunpack.c.l.b16 %v348
  %v1810 = vunpack.c.l.b16 %v349
  %v1811 = vunpack.c.h.b16 %v349
  %v1812 = vunpack.c.l.b16 %v350
  %v1813 = vunpack.c.l.b16 %v351
  %v1814 = vunpack.c.h.b16 %v351
  %v1815 = vunpack.c.l.b16 %v352
  %v1816 = vunpack.c.l.b16 %v353
  %v1817 = vunpack.c.h.b16 %v353
  %v1818 = vunpack.c.l.b16 %v354
  %v1819 = vunpack.c.l.b16 %v355
  %v1820 = vunpack.c.h.b16 %v355
  %v1821 = vunpack.c.l.b16 %v356
  %v1822 = vunpack.c.l.b16 %v357
  %v1823 = vunpack.c.h.b16 %v357
  %v1824 = vunpack.c.l.b16 %v358
  %v1825 = vunpack.c.l.b16 %v359
  %v1826 = vunpack.c.h.b16 %v359
  %v1827 = vunpack.c.l.b16 %v360
  %v1828 = vunpack.c.l.b16 %v361
  %v1829 = vunpack.c.h.b16 %v361
  %v1830 = vunpack.c.l.b16 %v362
  %v1831 = vunpack.c.l.b16 %v363
  %v1832 = vunpack.c.h.b16 %v363
  %v1833 = vunpack.c.l.b16 %v364
  %v1834 = vunpack.c.l.b16 %v365
  %v1835 = vunpack.c.h.b16 %v365
  %v1836 = vunpack.c.l.b16 %v366
  %v1837 = vunpack.c.l.b16 %v367
  %v1838 = vunpack.c.h.b16 %v367
  %v1839 = vunpack.c.l.b16 %v368
  %v1840 = vunpack.c.l.b16 %v369
  %v1841 = vunpack.c.h.b16 %v369
  %v1842 = vunpack.c.l.b16 %v370
  %v1843 = vunpack.c.l.b16 %v371
  %v1844 = vunpack.c.h.b16 %v371
  %v1845 = vunpack.c.l.b16 %v372
  %v1846 = vunpack.c.l.b16 %v373
  %v1847 = vunpack.c.h.b16 %v373
  %v1848 = vunpack.c.l.b16 %v374
  %v1849 = vunpack.c.l.b16 %v375
  %v1850 = vunpack.c.h.b16 %v375
  %v1851 = vunpack.c.l.b16 %v376
  %v1852 = vunpack.c.l.b16 %v377
  %v1853 = vunpack.c.h.b16 %v377
  %v1854 = vunpack.c.l.b16 %v378
  %v1855 = vunpack.c.l.b16 %v379
  %v1856 = vunpack.c.h.b16 %v379
  %v1857 = vunpack.c.l.b16 %v380
  %v1858 = vunpack.c.l.b16 %v381
  %v1859 = vunpack.c.h.b16 %v381
  %v1860 = vunpack.c.l.b16 %v382
  %v1861 = vunpack.c.l.b16 %v383
  %v1862 = vunpack.c.h.b16 %v383
  %v1863 = vunpack.c.l.b16 %v384
  %v1864 = vunpack.c.l.b16 %v385
  %v1865 = vunpack.c.h.b16 %v385
  %v1866 = vunpack.c.l.b16 %v386
  %v1867 = vunpack.c.l.b16 %v387
  %v1868 = vunpack.c.h.b16 %v387
  %v1869 = vunpack.c.l.b16 %v388
  %v1870 = vunpack.c.l.b16 %v389
  %v1871 = vunpack.c.h.b16 %v389
  %v1872 = vunpack.c.l.b16 %v390
  %v1873 = vunpack.c.l.b16 %v391
  %v1874 = vunpack.c.h.b16 %v391
  %v1875 = vunpack.c.l.b16 %v392
  %v1876 = vunpack.c.l.b16 %v393
  %v1877 = vunpack.c.h.b16 %v393
  %v1878 = vunpack.c.l.b16 %v394
  %v1879 = vunpack.c.l.b16 %v395
  %v1880 = vunpack.c.h.b16 %v395
  %v1881 = vunpack.c.l.b16 %v396
  %v1882 = vunpack.c.l.b16 %v397
  %v1883 = vunpack.c.h.b16 %v397
  %v1884 = vunpack.c.l.b16 %v398
  %v1885 = vunpack.c.l.b16 %v399
  %v1886 = vunpack.c.h.b16 %v399
  %v1887 = vunpack.c.l.b16 %v400
  %v1888 = vunpack.c.l.b16 %v401
  %v1889 = vunpack.c.h.b16 %v401
  %v1890 = vunpack.c.l.b16 %v402
  %v1891 = vunpack.c.l.b16 %v403
  %v1892 = vunpack.c.h.b16 %v403
  %v1893 = vunpack.c.l.b16 %v404
  %v1894 = vunpack.c.l.b16 %v405
  %v1895 = vunpack.c.h.b16 %v405
  %v1896 = vunpack.c.l.b16 %v406
  %v1897 = vunpack.c.l.b16 %v407
  %v1898 = vunpack.c.h.b16 %v407
  %v1899 = vunpack.c.l.b16 %v408
  %v1900 = vunpack.c.l.b16 %v409
  %v1901 = vunpack.c.h.b16 %v409
  %v1902 = vunpack.c.l.b16 %v410
  %v1903 = vunpack.c.l.b16 %v411
  %v1904 = vunpack.c.h.b16 %v411
  %v1905 = vunpack.c.l.b16 %v412
  %v1906 = vunpack.c.l.b16 %v413
  %v1907 = vunpack.c.h.b16 %v413
  %v1908 = vunpack.c.l.b16 %v414
  %v1909 = vunpack.c.l.b16 %v415
  %v1910 = vunpack.c.h.b16 %v415
  %v1911 = vunpack.c.l.b16 %v416
  %v1912 = vunpack.c.l.b16 %v417
  %v1913 = vunpack.c.h.b16 %v417
  %v1914 = vunpack.c.l.b16 %v418
  %v1915 = vunpack.c.l.b16 %v419
  %v1916 = vunpack.c.h.b16 %v419
  %v1917 = vunpack.c.l.b16 %v420
  %v1918 = vunpack.c.l.b16 %v421
  %v1919 = vunpack.c.h.b16 %v421
  %v1920 = vunpack.c.l.b16 %v422
  %v1921 = vunpack.c.l.b16 %v423
  %v1922 = vunpack.c.h.b16 %v423
  %v1923 = vunpack.c.l.b16 %v424
  %v1924 = vunpack.c.l.b16 %v425
  %v1925 = vunpack.c.h.b16 %v425
  %v1926 = vunpack.c.l.b16 %v426
  %v1927 = vunpack.c.l.b16 %v427
  %v1928 = vunpack.c.h.b16 %v427
  %v1929 = vunpack.c.l.b16 %v428
  %v1930 = vunpack.c.l.b16 %v429
  %v1931 = vunpack.c.h.b16 %v429
  %v1932 = vunpack.c.l.b16 %v430
  %v1933 = vunpack.c.l.b16 %v431
  %v1934 = vunpack.c.h.b16 %v431
  %v1935 = vunpack.c.l.b16 %v432
  %v1936 = vunpack.c.l.b16 %v433
  %v1937 = vunpack.c.h.b16 %v433
  %v1938 = vunpack.c.l.b16 %v434
  %v1939 = vunpack.c.l.b16 %v435
  %v1940 = vunpack.c.h.b16 %v435
  %v1941 = vunpack.c.l.b16 %v436
  %v1942 = vunpack.c.l.b16 %v437
  %v1943 = vunpack.c.h.b16 %v437
  %v1944 = vunpack.c.l.b16 %v438
  %v1945 = vunpack.c.l.b16 %v439
  %v1946 = vunpack.c.h.b16 %v439
  %v1947 = vunpack.c.l.b16 %v440
  %v1948 = vunpack.c.l.b16 %v441
  %v1949 = vunpack.c.h.b16 %v441
  %v1950 = vunpack.c.l.b16 %v442
  %v1951 = vunpack.c.l.b16 %v443
  %v1952 = vunpack.c.h.b16 %v443
  %v1953 = vunpack.c.l.b16 %v444
  %v1954 = vunpack.c.l.b16 %v445
  %v1955 = vunpack.c.h.b16 %v445
  %v1956 = vunpack.c.l.b16 %v446
  %v1957 = vunpack.c.l.b16 %v447
  %v1958 = vunpack.c.h.b16 %v447
  %v1959 = vunpack.c.l.b16 %v448
  %v1960 = vunpack.c.l.b16 %v449
  %v1961 = vunpack.c.h.b16 %v449
  %v1962 = vunpack.c.l.b16 %v450
  %v1963 = vunpack.c.l.b16 %v451
  %v1964 = vunpack.c.h.b16 %v451
  %v1965 = vunpack.c.l.b16 %v452
  %v1966 = vunpack.c.l.b16 %v453
  %v1967 = vunpack.c.h.b16 %v453
  %v1968 = vunpack.c.l.b16 %v454
  %v1969 = vunpack.c.l.b16 %v455
  %v1970 = vunpack.c.h.b16 %v455
  %v1971 = vunpack.c.l.b16 %v456
  %v1972 = vunpack.c.l.b16 %v457
  %v1973 = vunpack.c.h.b16 %v457
  %v1974 = vunpack.c.l.b16 %v458
  %v1975 = vunpack.c.l.b16 %v459
  %v1976 = vunpack.c.h.b16 %v459
  %v1977 = vunpack.c.l.b16 %v460
  %v1978 = vunpack.c.l.b16 %v461
  %v1979 = vunpack.c.h.b16 %v461
  %v1980 = vunpack.c.l.b16 %v462
  %v1981 = vunpack.c.l.b16 %v463
  %v1982 = vunpack.c.h.b16 %v463
  %v1983 = vunpack.c.l.b16 %v464
  %v1984 = vunpack.c.l.b16 %v465
  %v1985 = vunpack.c.h.b16 %v465
  %v1986 = vunpack.c.l.b16 %v466
  %v1987 = vunpack.c.l.b16 %v467
  %v1988 = vunpack.c.h.b16 %v467
  %v1989 = vunpack.c.l.b16 %v468
  %v1990 = vunpack.c.l.b16 %v469
  %v1991 = vunpack.c.h.b16 %v469
  %v1992 = vunpack.c.l.b16 %v470
  %v1993 = vunpack.c.l.b16 %v471
  %v1994 = vunpack.c.h.b16 %v471
  %v1995 = vunpack.c.l.b16 %v472
  %v1996 = vunpack.c.l.b16 %v473
  %v1997 = vunpack.c.h.b16 %v473
  %v1998 = vunpack.c.l.b16 %v474
  %v1999 = vunpack.c.l.b16 %v475
  %v2000 = vunpack.c.h.b16 %v475
  %v2001 = vunpack.c.l.b16 %v476
  %v2002 = vunpack.c.l.b16 %v477
  %v2003 = vunpack.c.h.b16 %v477
  %v2004 = vunpack.c.l.b16 %v478
  %v2005 = vunpack.c.l.b16 %v479
  %v2006 = vunpack.c.h.b16 %v479
  %v2007 = vunpack.c.l.b16 %v480
  %v2008 = vunpack.c.l.b16 %v481
  %v2009 = vunpack.c.h.b16 %v481
  %v2010 = vunpack.c.l.b16 %v482
  %v2011 = vunpack.c.l.b16 %v483
  %v2012 = vunpack.c.h.b16 %v483
  %v2013 = vunpack.c.l.b16 %v484
  %v2014 = vunpack.c.l.b16 %v485
  %v2015 = vunpack.c.h.b16 %v485
  %v2016 = vunpack.c.l.b16 %v486
  %v2017 = vunpack.c.l.b16 %v487
  %v2018 = vunpack.c.h.b16 %v487
  %v2019 = vunpack.c.l.b16 %v488
  %v2020 = vunpack.c.l.b16 %v489
  %v2021 = vunpack.c.h.b16 %v489
  %v2022 = vunpack.c.l.b16 %v490
  %v2023 = vunpack.c.l.b16 %v491
  %v2024 = vunpack.c.h.b16 %v491
  %v2025 = vunpack.c.l.b16 %v492
  %v2026 = vunpack.c.l.b16 %v493
  %v2027 = vunpack.c.h.b16 %v493
  %v2028 = vunpack.c.l.b16 %v494
  %v2029 = vunpack.c.l.b16 %v495
  %v2030 = vunpack.c.h.b16 %v495
  %v2031 = vunpack.c.l.b16 %v496
  %v2032 = vunpack.c.l.b16 %v497
  %v2033 = vunpack.c.h.b16 %v497
  %v2034 = vunpack.c.l.b16 %v498
  %v2035 = vunpack.c.l.b16 %v499
  %v2036 = vunpack.c.h.b16 %v499
  %v2037 = vunpack.c.l.b16 %v500
  %v2038 = vunpack.c.l.b16 %v501
  %v2039 = vunpack.c.h.b16 %v501
  %v2040 = vunpack.c.l.b16 %v502
  %v2041 = vunpack.c.l.b16 %v503
  %v2042 = vunpack.c.h.b16 %v503
  %v2043 = vunpack.c.l.b16 %v504
  %v2044 = vunpack.c.l.b16 %v505
  %v2045 = vunpack.c.h.b16 %v505
  %v2046 = vunpack.c.l.b16 %v506
  %v2047 = vunpack.c.l.b16 %v507
  %v2048 = vunpack.c.h.b16 %v507
  %v2049 = vunpack.c.l.b16 %v508
  %v2050 = vunpack.c.l.b16 %v509
  %v2051 = vunpack.c.h.b16 %v509
  %v2052 = vunpack.c.l.b16 %v510
  %v2053 = vunpack.c.l.b16 %v511
  %v2054 = vunpack.c.h.b16 %v511
  %v2055 = vunpack.c.l.b16 %v512
  %v2056 = vunpack.c.l.b16 %v513
  %v2057 = vunpack.c.h.b16 %v513
  %v2058 = vunpack.c.l.b16 %v514
  %v2059 = vunpack.c.l.b16 %v515
  %v2060 = vunpack.c.h.b16 %v515
  %v2061 = vunpack.c.l.b16 %v516
  %v2062 = vunpack.c.l.b16 %v517
  %v2063 = vunpack.c.h.b16 %v517
  %v2064 = vunpack.c.l.b16 %v518
  %v2065 = vunpack.c.l.b16 %v519
  %v2066 = vunpack.c.h.b16 %v519
  %v2067 = vunpack.c.l.b16 %v520
  %v2068 = vunpack.c.l.b16 %v521
  %v2069 = vunpack.c.h.b16 %v521
  %v2070 = vunpack.c.l.b16 %v522
  %v2071 = vunpack.c.l.b16 %v523
  %v2072 = vunpack.c.h.b16 %v523
  %v2073 = vunpack.c.l.b16 %v524
  %v2074 = vunpack.c.l.b16 %v525
  %v2075 = vunpack.c.h.b16 %v525
  %v2076 = vunpack.c.l.b16 %v526
  %v2077 = vunpack.c.l.b16 %v527
  %v2078 = vunpack.c.h.b16 %v527
  %v2079 = vunpack.c.l.b16 %v528
  %v2080 = vunpack.c.l.b16 %v529
  %v2081 = vunpack.c.h.b16 %v529
  %v2082 = vunpack.c.l.b16 %v530
  %v2083 = vunpack.c.l.b16 %v531
  %v2084 = vunpack.c.h.b16 %v531
  %v2085 = vunpack.c.l.b16 %v532
  %v2086 = vunpack.c.l.b16 %v533
  %v2087 = vunpack.c.h.b16 %v533
  %v2088 = vunpack.c.l.b16 %v534
  %v2089 = vunpack.c.l.b16 %v535
  %v2090 = vunpack.c.h.b16 %v535
  %v2091 = vunpack.c.l.b16 %v536
  %v2092 = vunpack.c.l.b16 %v537
  %v2093 = vunpack.c.h.b16 %v537
  %v2094 = vunpack.c.l.b16 %v538
  %v2095 = vunpack.c.l.b16 %v539
  %v2096 = vunpack.c.h.b16 %v539
  %v2097 = vunpack.c.l.b16 %v540
  %v2098 = vunpack.c.l.b16 %v541
  %v2099 = vunpack.c.h.b16 %v541
  %v2100 = vunpack.c.l.b16 %v542
  %v2101 = vunpack.c.l.b16 %v543
  %v2102 = vunpack.c.h.b16 %v543
  %v2103 = vunpack.c.l.b16 %v544
  %v2104 = vunpack.c.l.b16 %v545
  %v2105 = vunpack.c.h.b16 %v545
  %v2106 = vunpack.c.l.b16 %v546
  %v2107 = vunpack.c.l.b16 %v547
  %v2108 = vunpack.c.h.b16 %v547
  %v2109 = vunpack.c.l.b16 %v548
  %v2110 = vunpack.c.l.b16 %v549
  %v2111 = vunpack.c.h.b16 %v549
  %v2112 = vunpack.c.l.b16 %v550
  %v2113 = vunpack.c.l.b16 %v551
  %v2114 = vunpack.c.h.b16 %v551
  %v2115 = vunpack.c.l.b16 %v552
  %v2116 = vunpack.c.l.b16 %v553
  %v2117 = vunpack.c.h.b16 %v553
  %v2118 = vunpack.c.l.b16 %v554
  %v2119 = vunpack.c.l.b16 %v555
  %v2120 = vunpack.c.h.b16 %v555
  %v2121 = vunpack.c.l.b16 %v556
  %v2122 = vunpack.c.l.b16 %v557
  %v2123 = vunpack.c.h.b16 %v557
  %v2124 = vunpack.c.l.b16 %v558
  %v2125 = vunpack.c.l.b16 %v559
  %v2126 = vunpack.c.h.b16 %v559
  %v2127 = vunpack.c.l.b16 %v560
  %v2128 = vunpack.c.l.b16 %v561
  %v2129 = vunpack.c.h.b16 %v561
  %v2130 = vunpack.c.l.b16 %v562
  %v2131 = vunpack.c.l.b16 %v563
  %v2132 = vunpack.c.h.b16 %v563
  %v2133 = vunpack.c.l.b16 %v564
  %v2134 = vunpack.c.l.b16 %v565
  %v2135 = vunpack.c.h.b16 %v565
  %v2136 = vunpack.c.l.b16 %v566
  %v2137 = vunpack.c.l.b16 %v567
  %v2138 = vunpack.c.h.b16 %v567
  %v2139 = vunpack.c.l.b16 %v568
  %v2140 = vunpack.c.l.b16 %v569
  %v2141 = vunpack.c.h.b16 %v569
  %v2142 = vunpack.c.l.b16 %v570
  %v2143 = vunpack.c.l.b16 %v571
  %v2144 = vunpack.c.h.b16 %v571
  %v2145 = vunpack.c.l.b16 %v572
  %v2146 = vunpack.c.l.b16 %v573
  %v2147 = vunpack.c.h.b16 %v573
  %v2148 = vunpack.c.l.b16 %v574
  %v2149 = vunpack.c.l.b16 %v575
  %v2150 = vunpack.c.h.b16 %v575
  %v2151 = vunpack.c.l.b16 %v576
  %v2152 = vunpack.c.l.b16 %v577
  %v2153 = vunpack.c.h.b16 %v577
  %v2154 = vunpack.c.l.b16 %v578
  %v2155 = vunpack.c.l.b16 %v579
  %v2156 = vunpack.c.h.b16 %v579
  %v2157 = vunpack.c.l.b16 %v580
  %v2158 = vunpack.c.l.b16 %v581
  %v2159 = vunpack.c.h.b16 %v581
  %v2160 = vunpack.c.l.b16 %v582
  %v2161 = vunpack.c.l.b16 %v583
  %v2162 = vunpack.c.h.b16 %v583
  %v2163 = vunpack.c.l.b16 %v584
  %v2164 = vunpack.c.l.b16 %v585
  %v2165 = vunpack.c.h.b16 %v585
  %v2166 = vunpack.c.l.b16 %v586
  %v2167 = vunpack.c.l.b16 %v587
  %v2168 = vunpack.c.h.b16 %v587
  %v2169 = vunpack.c.l.b16 %v588
  %v2170 = vunpack.c.l.b16 %v589
  %v2171 = vunpack.c.h.b16 %v589
  %v2172 = vunpack.c.l.b16 %v590
  %v2173 = vunpack.c.l.b16 %v591
  %v2174 = vunpack.c.h.b16 %v591
  %v2175 = vunpack.c.l.b16 %v592
  %v2176 = vunpack.c.l.b16 %v593
  %v2177 = vunpack.c.h.b16 %v593
  %v2178 = vunpack.c.l.b16 %v594
  %v2179 = vunpack.c.l.b16 %v595
  %v2180 = vunpack.c.h.b16 %v595
  %v2181 = vunpack.c.l.b16 %v596
  %v2182 = vunpack.c.l.b16 %v597
  %v2183 = vunpack.c.h.b16 %v597
  %v2184 = vunpack.c.l.b16 %v598
  %v2185 = vunpack.c.l.b16 %v599
  %v2186 = vunpack.c.h.b16 %v599
  %v2187 = vunpack.c.l.b16 %v600
  %v2188 = vunpack.c.l.b16 %v601
  %v2189 = vunpack.c.h.b16 %v601
  %v2190 = vunpack.c.l.b16 %v602
  %v2191 = vunpack.c.l.b16 %v603
  %v2192 = vunpack.c.h.b16 %v603
  %v2193 = vunpack.c.l.b16 %v604
  %v2194 = vunpack.c.l.b16 %v605
  %v2195 = vunpack.c.h.b16 %v605
  %v2196 = vunpack.c.l.b16 %v606
  %v2197 = vunpack.c.l.b16 %v607
  %v2198 = vunpack.c.h.b16 %v607
  %v2199 = vunpack.c.l.b16 %v608
  %v2200 = vunpack.c.l.b16 %v609
  %v2201 = vunpack.c.h.b16 %v609
  %v2202 = vunpack.c.l.b16 %v610
  %v2203 = vunpack.c.l.b16 %v611
  %v2204 = vunpack.c.h.b16 %v611
  %v2205 = vunpack.c.l.b16 %v612
  %v2206 = vunpack.c.l.b16 %v613
  %v2207 = vunpack.c.h.b16 %v613
  %v2208 = vunpack.c.l.b16 %v614
  %v2209 = vunpack.c.l.b16 %v615
  %v2210 = vunpack.c.h.b16 %v615
  %v2211 = vunpack.c.l.b16 %v616
  %v2212 = vunpack.c.l.b16 %v617
  %v2213 = vunpack.c.h.b16 %v617
  %v2214 = vunpack.c.l.b16 %v618
  %v2215 = vunpack.c.l.b16 %v619
  %v2216 = vunpack.c.h.b16 %v619
  %v2217 = vunpack.c.l.b16 %v620
  %v2218 = vunpack.c.l.b16 %v621
  %v2219 = vunpack.c.h.b16 %v621
  %v2220 = vunpack.c.l.b16 %v622
  %v2221 = vunpack.c.l.b16 %v623
  %v2222 = vunpack.c.h.b16 %v623
  %v2223 = vunpack.c.l.b16 %v624
  %v2224 = vunpack.c.l.b16 %v625
  %v2225 = vunpack.c.h.b16 %v625
  %v2226 = vunpack.c.l.b16 %v626
  %v2227 = vunpack.c.l.b16 %v627
  %v2228 = vunpack.c.h.b16 %v627
  %v2229 = vunpack.c.l.b16 %v628
  %v2230 = vpack.c.b16 %v1369, %v1366
  %v2231 = vpack.c.b16 %v1370, %v1367
  %v2232 = vpack.c.b16 %v1371, %v1368
  %v2233 = vpack.c.b16 %v1375, %v1372
  %v2234 = vpack.c.b16 %v1376, %v1373
  %v2235 = vpack.c.b16 %v1377, %v1374
  %v2236 = vpack.c.b16 %v1381, %v1378
  %v2237 = vpack.c.b16 %v1382, %v1379
  %v2238 = vpack.c.b16 %v1383, %v1380
  %v2239 = vpack.c.b16 %v1387, %v1384
  %v2240 = vpack.c.b16 %v1388, %v1385
  %v2241 = vpack.c.b16 %v1389, %v1386
  %v2242 = vpack.c.b16 %v1393, %v1390
  %v2243 = vpack.c.b16 %v1394, %v1391
  %v2244 = vpack.c.b16 %v1395, %v1392
  %v2245 = vpack.c.b16 %v1399, %v1396
  %v2246 = vpack.c.b16 %v1400, %v1397
  %v2247 = vpack.c.b16 %v1401, %v1398
  %v2248 = vpack.c.b16 %v1405, %v1402
  %v2249 = vpack.c.b16 %v1406, %v1403
  %v2250 = vpack.c.b16 %v1407, %v1404
  %v2251 = vpack.c.b16 %v1411, %v1408
  %v2252 = vpack.c.b16 %v1412, %v1409
  %v2253 = vpack.c.b16 %v1413, %v1410
  %v2254 = vpack.c.b16 %v1417, %v1414
  %v2255 = vpack.c.b16 %v1418, %v1415
  %v2256 = vpack.c.b16 %v1419, %v1416
  %v2257 = vpack.c.b16 %v1423, %v1420
  %v2258 = vpack.c.b16 %v1424, %v1421
  %v2259 = vpack.c.b16 %v1425, %v1422
  %v2260 = vpack.c.b16 %v1429, %v1426
  %v2261 = vpack.c.b16 %v1430, %v1427
  %v2262 = vpack.c.b16 %v1431, %v1428
  %v2263 = vpack.c.b16 %v1435, %v1432
  %v2264 = vpack.c.b16 %v1436, %v1433
  %v2265 = vpack.c.b16 %v1437, %v1434
  %v2266 = vpack.c.b16 %v1441, %v1438
  %v2267 = vpack.c.b16 %v1442, %v1439
  %v2268 = vpack.c.b16 %v1443, %v1440
  %v2269 = vpack.c.b16 %v1447, %v1444
  %v2270 = vpack.c.b16 %v1448, %v1445
  %v2271 = vpack.c.b16 %v1449, %v1446
  %v2272 = vpack.c.b16 %v1453, %v1450
  %v2273 = vpack.c.b16 %v1454, %v1451
  %v2274 = vpack.c.b16 %v1455, %v1452
  %v2275 = vpack.c.b16 %v1459, %v1456
  %v2276 = vpack.c.b16 %v1460, %v1457
  %v2277 = vpack.c.b16 %v1461, %v1458
  %v2278 = vpack.c.b16 %v1465, %v1462
  %v2279 = vpack.c.b16 %v1466, %v1463
  %v2280 = vpack.c.b16 %v1467, %v1464
  %v2281 = vpack.c.b16 %v1471, %v1468
  %v2282 = vpack.c.b16 %v1472, %v1469
  %v2283 = vpack.c.b16 %v1473, %v1470
  %v2284 = vpack.c.b16 %v1477, %v1474
  %v2285 = vpack.c.b16 %v1478, %v1475
  %v2286 = vpack.c.b16 %v1479, %v1476
  %v2287 = vpack.c.b16 %v1483, %v1480
  %v2288 = vpack.c.b16 %v1484, %v1481
  %v2289 = vpack.c.b16 %v1485, %v1482
  %v2290 = vpack.c.b16 %v1489, %v1486
  %v2291 = vpack.c.b16 %v1490, %v1487
  %v2292 = vpack.c.b16 %v1491, %v1488
  %v2293 = vpack.c.b16 %v1495, %v1492
  %v2294 = vpack.c.b16 %v1496, %v1493
  %v2295 = vpack.c.b16 %v1497, %v1494
  %v2296 = vpack.c.b16 %v1501, %v1498
  %v2297 = vpack.c.b16 %v1502, %v1499
  %v2298 = vpack.c.b16 %v1503, %v1500
  %v2299 = vpack.c.b16 %v1507, %v1504
  %v2300 = vpack.c.b16 %v1508, %v1505
  %v2301 = vpack.c.b16 %v1509, %v1506
  %v2302 = vpack.c.b16 %v1513, %v1510
  %v2303 = vpack.c.b16 %v1514, %v1511
  %v2304 = vpack.c.b16 %v1515, %v1512
  %v2305 = vpack.c.b16 %v1519, %v1516
  %v2306 = vpack.c.b16 %v1520, %v1517
  %v2307 = vpack.c.b16 %v1521, %v1518
  %v2308 = vpack.c.b16 %v1525, %v1522
  %v2309 = vpack.c.b16 %v1526, %v1523
  %v2310 = vpack.c.b16 %v1527, %v1524
  %v2311 = vpack.c.b16 %v1531, %v1528
  %v2312 = vpack.c.b16 %v1532, %v1529
  %v2313 = vpack.c.b16 %v1533, %v1530
  %v2314 = vpack.c.b16 %v1537, %v1534
  %v2315 = vpack.c.b16 %v1538, %v1535
  %v2316 = vpack.c.b16 %v1539, %v1536
  %v2317 = vpack.c.b16 %v1543, %v1540
  %v2318 = vpack.c.b16 %v1544, %v1541
  %v2319 = vpack.c.b16 %v1545, %v1542
  %v2320 = vpack.c.b16 %v1549, %v1546
  %v2321 = vpack.c.b16 %v1550, %v1547
  %v2322 = vpack.c.b16 %v1551, %v1548
  %v2323 = vpack.c.b16 %v1555, %v1552
  %v2324 = vpack.c.b16 %v1556, %v1553
  %v2325 = vpack.c.b16 %v1557, %v1554
  %v2326 = vpack.c.b16 %v1561, %v1558
  %v2327 = vpack.c.b16 %v1562, %v1559
  %v2328 = vpack.c.b16 %v1563, %v1560
  %v2329 = vpack.c.b16 %v1567, %v1564
  %v2330 = vpack.c.b16 %v1568, %v1565
  %v2331 = vpack.c.b16 %v1569, %v1566
  %v2332 = vpack.c.b16 %v1573, %v1570
  %v2333 = vpack.c.b16 %v1574, %v1571
  %v2334 = vpack.c.b16 %v1575, %v1572
  %v2335 = vpack.c.b16 %v1579, %v1576
  %v2336 = vpack.c.b16 %v1580, %v1577
  %v2337 = vpack.c.b16 %v1581, %v1578
  %v2338 = vpack.c.b16 %v1585, %v1582
  %v2339 = vpack.c.b16 %v1586, %v1583
  %v2340 = vpack.c.b16 %v1587, %v1584
  %v2341 = vpack.c.b16 %v1591, %v1588
  %v2342 = vpack.c.b16 %v1592, %v1589
  %v2343 = vpack.c.b16 %v1593, %v1590
  %v2344 = vpack.c.b16 %v1597, %v1594
  %v2345 = vpack.c.b16 %v1598, %v1595
  %v2346 = vpack.c.b16 %v1599, %v1596
  %v2347 = vpack.c.b16 %v1603, %v1600
  %v2348 = vpack.c.b16 %v1604, %v1601
  %v2349 = vpack.c.b16 %v1605, %v1602
  %v2350 = vpack.c.b16 %v1609, %v1606
  %v2351 = vpack.c.b16 %v1610, %v1607
  %v2352 = vpack.c.b16 %v1611, %v1608
  %v2353 = vpack.c.b16 %v1615, %v1612
  %v2354 = vpack.c.b16 %v1616, %v1613
  %v2355 = vpack.c.b16 %v1617, %v1614
  %v2356 = vpack.c.b16 %v1621, %v1618
  %v2357 = vpack.c.b16 %v1622, %v1619
  %v2358 = vpack.c.b16 %v1623, %v1620
  %v2359 = vpack.c.b16 %v1627, %v1624
  %v2360 = vpack.c.b16 %v1628, %v1625
  %v2361 = vpack.c.b16 %v1629, %v1626
  %v2362 = vpack.c.b16 %v1633, %v1630
  %v2363 = vpack.c.b16 %v1634, %v1631
  %v2364 = vpack.c.b16 %v1635, %v1632
  %v2365 = vpack.c.b16 %v1639, %v1636
  %v2366 = vpack.c.b16 %v1640, %v1637
  %v2367 = vpack.c.b16 %v1641, %v1638
  %v2368 = vpack.c.b16 %v1645, %v1642
  %v2369 = vpack.c.b16 %v1646, %v1643
  %v2370 = vpack.c.b16 %v1647, %v1644
  %v2371 = vpack.c.b16 %v1651, %v1648
  %v2372 = vpack.c.b16 %v1652, %v1649
  %v2373 = vpack.c.b16 %v1653, %v1650
  %v2374 = vpack.c.b16 %v1657, %v1654
  %v2375 = vpack.c.b16 %v1658, %v1655
  %v2376 = vpack.c.b16 %v1659, %v1656
  %v2377 = vpack.c.b16 %v1663, %v1660
  %v2378 = vpack.c.b16 %v1664, %v1661
  %v2379 = vpack.c.b16 %v1665, %v1662
  %v2380 = vpack.c.b16 %v1669, %v1666
  %v2381 = vpack.c.b16 %v1670, %v1667
  %v2382 = vpack.c.b16 %v1671, %v1668
  %v2383 = vpack.c.b16 %v1675, %v1672
  %v2384 = vpack.c.b16 %v1676, %v1673
  %v2385 = vpack.c.b16 %v1677, %v1674
  %v2386 = vpack.c.b16 %v1681, %v1678
  %v2387 = vpack.c.b16 %v1682, %v1679
  %v2388 = vpack.c.b16 %v1683, %v1680
  %v2389 = vpack.c.b16 %v1687, %v1684
  %v2390 = vpack.c.b16 %v1688, %v1685
  %v2391 = vpack.c.b16 %v1689, %v1686
  %v2392 = vpack.c.b16 %v1693, %v1690
  %v2393 = vpack.c.b16 %v1694, %v1691
  %v2394 = vpack.c.b16 %v1695, %v1692
  %v2395 = vpack.c.b16 %v1699, %v1696
  %v2396 = vpack.c.b16 %v1700, %v1697
  %v2397 = vpack.c.b16 %v1701, %v1698
  %v2398 = vpack.c.b16 %v1705, %v1702
  %v2399 = vpack.c.b16 %v1706, %v1703
  %v2400 = vpack.c.b16 %v1707, %v1704
  %v2401 = vpack.c.b16 %v1711, %v1708
  %v2402 = vpack.c.b16 %v1712, %v1709
  %v2403 = vpack.c.b16 %v1713, %v1710
  %v2404 = vpack.c.b16 %v1717, %v1714
  %v2405 = vpack.c.b16 %v1718, %v1715
  %v2406 = vpack.c.b16 %v1719, %v1716
  %v2407 = vpack.c.b16 %v1723, %v1720
  %v2408 = vpack.c.b16 %v1724, %v1721
  %v2409 = vpack.c.b16 %v1725, %v1722
  %v2410 = vpack.c.b16 %v1729, %v1726
  %v2411 = vpack.c.b16 %v1730, %v1727
  %v2412 = vpack.c.b16 %v1731, %v1728
  %v2413 = vpack.c.b16 %v1735, %v1732
  %v2414 = vpack.c.b16 %v1736, %v1733
  %v2415 = vpack.c.b16 %v1737, %v1734
  %v2416 = vpack.c.b16 %v1741, %v1738
  %v2417 = vpack.c.b16 %v1742, %v1739
  %v2418 = vpack.c.b16 %v1743, %v1740
  %v2419 = vpack.c.b16 %v1747, %v1744
  %v2420 = vpack.c.b16 %v1748, %v1745
  %v2421 = vpack.c.b16 %v1749, %v1746
  %v2422 = vpack.c.b16 %v1753, %v1750
  %v2423 = vpack.c.b16 %v1754, %v1751
  %v2424 = vpack.c.b16 %v1755, %v1752
  %v2425 = vpack.c.b16 %v1759, %v1756
  %v2426 = vpack.c.b16 %v1760, %v1757
  %v2427 = vpack.c.b16 %v1761, %v1758
  %v2428 = vpack.c.b16 %v1765, %v1762
  %v2429 = vpack.c.b16 %v1766, %v1763
  %v2430 = vpack.c.b16 %v1767, %v1764
  %v2431 = vpack.c.b16 %v1771, %v1768
  %v2432 = vpack.c.b16 %v1772, %v1769
  %v2433 = vpack.c.b16 %v1773, %v1770
  %v2434 = vpack.c.b16 %v1777, %v1774
  %v2435 = vpack.c.b16 %v1778, %v1775
  %v2436 = vpack.c.b16 %v1779, %v1776
  %v2437 = vpack.c.b16 %v1783, %v1780
  %v2438 = vpack.c.b16 %v1784, %v1781
  %v2439 = vpack.c.b16 %v1785, %v1782
  %v2440 = vpack.c.b16 %v1789, %v1786
  %v2441 = vpack.c.b16 %v1790, %v1787
  %v2442 = vpack.c.b16 %v1791, %v1788
  %v2443 = vpack.c.b16 %v1795, %v1792
  %v2444 = vpack.c.b16 %v1796, %v1793
  %v2445 = vpack.c.b16 %v1797, %v1794
  %v2446 = vpack.c.b16 %v1801, %v1798
  %v2447 = vpack.c.b16 %v1802, %v1799
  %v2448 = vpack.c.b16 %v1803, %v1800
  %v2449 = vpack.c.b16 %v1807, %v1804
  %v2450 = vpack.c.b16 %v1808, %v1805
  %v2451 = vpack.c.b16 %v1809, %v1806
  %v2452 = vpack.c.b16 %v1813, %v1810
  %v2453 = vpack.c.b16 %v1814, %v1811
  %v2454 = vpack.c.b16 %v1815, %v1812
  %v2455 = vpack.c.b16 %v1819, %v1816
  %v2456 = vpack.c.b16 %v1820, %v1817
  %v2457 = vpack.c.b16 %v1821, %v1818
  %v2458 = vpack.c.b16 %v1825, %v1822
  %v2459 = vpack.c.b16 %v1826, %v1823
  %v2460 = vpack.c.b16 %v1827, %v1824
  %v2461 = vpack.c.b16 %v1831, %v1828
  %v2462 = vpack.c.b16 %v1832, %v1829
  %v2463 = vpack.c.b16 %v1833, %v1830
  %v2464 = vpack.c.b16 %v1837, %v1834
  %v2465 = vpack.c.b16 %v1838, %v1835
  %v2466 = vpack.c.b16 %v1839, %v1836
  %v2467 = vpack.c.b16 %v1843, %v1840
  %v2468 = vpack.c.b16 %v1844, %v1841
  %v2469 = vpack.c.b16 %v1845, %v1842
  %v2470 = vpack.c.b16 %v1849, %v1846
  %v2471 = vpack.c.b16 %v1850, %v1847
  %v2472 = vpack.c.b16 %v1851, %v1848
  %v2473 = vpack.c.b16 %v1855, %v1852
  %v2474 = vpack.c.b16 %v1856, %v1853
  %v2475 = vpack.c.b16 %v1857, %v1854
  %v2476 = vpack.c.b16 %v1861, %v1858
  %v2477 = vpack.c.b16 %v1862, %v1859
  %v2478 = vpack.c.b16 %v1863, %v1860
  %v2479 = vpack.c.b16 %v1867, %v1864
  %v2480 = vpack.c.b16 %v1868, %v1865
  %v2481 = vpack.c.b16 %v1869, %v1866
  %v2482 = vpack.c.b16 %v1873, %v1870
  %v2483 = vpack.c.b16 %v1874, %v1871
  %v2484 = vpack.c.b16 %v1875, %v1872
  %v2485 = vpack.c.b16 %v1879, %v1876
  %v2486 = vpack.c.b16 %v1880, %v1877
  %v2487 = vpack.c.b16 %v1881, %v1878
  %v2488 = vpack.c.b16 %v1885, %v1882
  %v2489 = vpack.c.b16 %v1886, %v1883
  %v2490 = vpack.c.b16 %v1887, %v1884
  %v2491 = vpack.c.b16 %v1891, %v1888
  %v2492 = vpack.c.b16 %v1892, %v1889
  %v2493 = vpack.c.b16 %v1893, %v1890
  %v2494 = vpack.c.b16 %v1897, %v1894
  %v2495 = vpack.c.b16 %v1898, %v1895
  %v2496 = vpack.c.b16 %v1899, %v1896
  %v2497 = vpack.c.b16 %v1903, %v1900
  %v2498 = vpack.c.b16 %v1904, %v1901
  %v2499 = vpack.c.b16 %v1905, %v1902
  %v2500 = vpack.c.b16 %v1909, %v1906
  %v2501 = vpack.c.b16 %v1910, %v1907
  %v2502 = vpack.c.b16 %v1911, %v1908
  %v2503 = vpack.c.b16 %v1915, %v1912
  %v2504 = vpack.c.b16 %v1916, %v1913
  %v2505 = vpack.c.b16 %v1917, %v1914
  %v2506 = vpack.c.b16 %v1921, %v1918
  %v2507 = vpack.c.b16 %v1922, %v1919
  %v2508 = vpack.c.b16 %v1923, %v1920
  %v2509 = vpack.c.b16 %v1927, %v1924
  %v2510 = vpack.c.b16 %v1928, %v1925
  %v2511 = vpack.c.b16 %v1929, %v1926
  %v2512 = vpack.c.b16 %v1933, %v1930
  %v2513 = vpack.c.b16 %v1934, %v1931
  %v2514 = vpack.c.b16 %v1935, %v1932
  %v2515 = vpack.c.b16 %v1939, %v1936
  %v2516 = vpack.c.b16 %v1940, %v1937
  %v2517 = vpack.c.b16 %v1941, %v1938
  %v2518 = vpack.c.b16 %v1945, %v1942
  %v2519 = vpack.c.b16 %v1946, %v1943
  %v2520 = vpack.c.b16 %v1947, %v1944
  %v2521 = vpack.c.b16 %v1951, %v1948
  %v2522 = vpack.c.b16 %v1952, %v1949
  %v2523 = vpack.c.b16 %v1953, %v1950
  %v2524 = vpack.c.b16 %v1957, %v1954
  %v2525 = vpack.c.b16 %v1958, %v1955
  %v2526 = vpack.c.b16 %v1959, %v1956
  %v2527 = vpack.c.b16 %v1963, %v1960
  %v2528 = vpack.c.b16 %v1964, %v1961
  %v2529 = vpack.c.b16 %v1965, %v1962
  %v2530 = vpack.c.b16 %v1969, %v1966
  %v2531 = vpack.c.b16 %v1970, %v1967
  %v2532 = vpack.c.b16 %v1971, %v1968
  %v2533 = vpack.c.b16 %v1975, %v1972
  %v2534 = vpack.c.b16 %v1976, %v1973
  %v2535 = vpack.c.b16 %v1977, %v1974
  %v2536 = vpack.c.b16 %v1981, %v1978
  %v2537 = vpack.c.b16 %v1982, %v1979
  %v2538 = vpack.c.b16 %v1983, %v1980
  %v2539 = vpack.c.b16 %v1987, %v1984
  %v2540 = vpack.c.b16 %v1988, %v1985
  %v2541 = vpack.c.b16 %v1989, %v1986
  %v2542 = vpack.c.b16 %v1993, %v1990
  %v2543 = vpack.c.b16 %v1994, %v1991
  %v2544 = vpack.c.b16 %v1995, %v1992
  %v2545 = vpack.c.b16 %v1999, %v1996
  %v2546 = vpack.c.b16 %v2000, %v1997
  %v2547 = vpack.c.b16 %v2001, %v1998
  %v2548 = vpack.c.b16 %v2005, %v2002
  %v2549 = vpack.c.b16 %v2006, %v2003
  %v2550 = vpack.c.b16 %v2007, %v2004
  %v2551 = vpack.c.b16 %v2011, %v2008
  %v2552 = vpack.c.b16 %v2012, %v2009
  %v2553 = vpack.c.b16 %v2013, %v2010
  %v2554 = vpack.c.b16 %v2017, %v2014
  %v2555 = vpack.c.b16 %v2018, %v2015
  %v2556 = vpack.c.b16 %v2019, %v2016
  %v2557 = vpack.c.b16 %v2023, %v2020
  %v2558 = vpack.c.b16 %v2024, %v2021
  %v2559 = vpack.c.b16 %v2025, %v2022
  %v2560 = vpack.c.b16 %v2029, %v2026
  %v2561 = vpack.c.b16 %v2030, %v2027
  %v2562 = vpack.c.b16 %v2031, %v2028
  %v2563 = vpack.c.b16 %v2035, %v2032
  %v2564 = vpack.c.b16 %v2036, %v2033
  %v2565 = vpack.c.b16 %v2037, %v2034
  %v2566 = vpack.c.b16 %v2041, %v2038
  %v2567 = vpack.c.b16 %v2042, %v2039
  %v2568 = vpack.c.b16 %v2043, %v2040
  %v2569 = vpack.c.b16 %v2047, %v2044
  %v2570 = vpack.c.b16 %v2048, %v2045
  %v2571 = vpack.c.b16 %v2049, %v2046
  %v2572 = vpack.c.b16 %v2053, %v2050
  %v2573 = vpack.c.b16 %v2054, %v2051
  %v2574 = vpack.c.b16 %v2055, %v2052
  %v2575 = vpack.c.b16 %v2059, %v2056
  %v2576 = vpack.c.b16 %v2060, %v2057
  %v2577 = vpack.c.b16 %v2061, %v2058
  %v2578 = vpack.c.b16 %v2065, %v2062
  %v2579 = vpack.c.b16 %v2066, %v2063
  %v2580 = vpack.c.b16 %v2067, %v2064
  %v2581 = vpack.c.b16 %v2071, %v2068
  %v2582 = vpack.c.b16 %v2072, %v2069
  %v2583 = vpack.c.b16 %v2073, %v2070
  %v2584 = vpack.c.b16 %v2077, %v2074
  %v2585 = vpack.c.b16 %v2078, %v2075
  %v2586 = vpack.c.b16 %v2079, %v2076
  %v2587 = vpack.c.b16 %v2083, %v2080
  %v2588 = vpack.c.b16 %v2084, %v2081
  %v2589 = vpack.c.b16 %v2085, %v2082
  %v2590 = vpack.c.b16 %v2089, %v2086
  %v2591 = vpack.c.b16 %v2090, %v2087
  %v2592 = vpack.c.b16 %v2091, %v2088
  %v2593 = vpack.c.b16 %v2095, %v2092
  %v2594 = vpack.c.b16 %v2096, %v2093
  %v2595 = vpack.c.b16 %v2097, %v2094
  %v2596 = vpack.c.b16 %v2101, %v2098
  %v2597 = vpack.c.b16 %v2102, %v2099
  %v2598 = vpack.c.b16 %v2103, %v2100
  %v2599 = vpack.c.b16 %v2107, %v2104
  %v2600 = vpack.c.b16 %v2108, %v2105
  %v2601 = vpack.c.b16 %v2109, %v2106
  %v2602 = vpack.c.b16 %v2113, %v2110
  %v2603 = vpack.c.b16 %v2114, %v2111
  %v2604 = vpack.c.b16 %v2115, %v2112
  %v2605 = vpack.c.b16 %v2119, %v2116
  %v2606 = vpack.c.b16 %v2120, %v2117
  %v2607 = vpack.c.b16 %v2121, %v2118
  %v2608 = vpack.c.b16 %v2125, %v2122
  %v2609 = vpack.c.b16 %v2126, %v2123
  %v2610 = vpack.c.b16 %v2127, %v2124
  %v2611 = vpack.c.b16 %v2131, %v2128
  %v2612 = vpack.c.b16 %v2132, %v2129
  %v2613 = vpack.c.b16 %v2133, %v2130
  %v2614 = vpack.c.b16 %v2137, %v2134
  %v2615 = vpack.c.b16 %v2138, %v2135
  %v2616 = vpack.c.b16 %v2139, %v2136
  %v2617 = vpack.c.b16 %v2143, %v2140
  %v2618 = vpack.c.b16 %v2144, %v2141
  %v2619 = vpack.c.b16 %v2145, %v2142
  %v2620 = vpack.c.b16 %v2149, %v2146
  %v2621 = vpack.c.b16 %v2150, %v2147
  %v2622 = vpack.c.b16 %v2151, %v2148
  %v2623 = vpack.c.b16 %v2155, %v2152
  %v2624 = vpack.c.b16 %v2156, %v2153
  %v2625 = vpack.c.b16 %v2157, %v2154
  %v2626 = vpack.c.b16 %v2161, %v2158
  %v2627 = vpack.c.b16 %v2162, %v2159
  %v2628 = vpack.c.b16 %v2163, %v2160
  %v2629 = vpack.c.b16 %v2167, %v2164
  %v2630 = vpack.c.b16 %v2168, %v2165
  %v2631 = vpack.c.b16 %v2169, %v2166
  %v2632 = vpack.c.b16 %v2173, %v2170
  %v2633 = vpack.c.b16 %v2174, %v2171
  %v2634 = vpack.c.b16 %v2175, %v2172
  %v2635 = vpack.c.b16 %v2179, %v2176
  %v2636 = vpack.c.b16 %v2180, %v2177
  %v2637 = vpack.c.b16 %v2181, %v2178
  %v2638 = vpack.c.b16 %v2185, %v2182
  %v2639 = vpack.c.b16 %v2186, %v2183
  %v2640 = vpack.c.b16 %v2187, %v2184
  %v2641 = vpack.c.b16 %v2191, %v2188
  %v2642 = vpack.c.b16 %v2192, %v2189
  %v2643 = vpack.c.b16 %v2193, %v2190
  %v2644 = vpack.c.b16 %v2197, %v2194
  %v2645 = vpack.c.b16 %v2198, %v2195
  %v2646 = vpack.c.b16 %v2199, %v2196
  %v2647 = vpack.c.b16 %v2203, %v2200
  %v2648 = vpack.c.b16 %v2204, %v2201
  %v2649 = vpack.c.b16 %v2205, %v2202
  %v2650 = vpack.c.b16 %v2209, %v2206
  %v2651 = vpack.c.b16 %v2210, %v2207
  %v2652 = vpack.c.b16 %v2211, %v2208
  %v2653 = vpack.c.b16 %v2215, %v2212
  %v2654 = vpack.c.b16 %v2216, %v2213
  %v2655 = vpack.c.b16 %v2217, %v2214
  %v2656 = vpack.c.b16 %v2221, %v2218
  %v2657 = vpack.c.b16 %v2222, %v2219
  %v2658 = vpack.c.b16 %v2223, %v2220
  %v2659 = vpack.c.b16 %v2227, %v2224
  %v2660 = vpack.c.b16 %v2228, %v2225
  %v2661 = vpack.c.b16 %v2229, %v2226
  %3094 = vmatpush.bf16.msra.mxu0 %v2251
  %3095 = vmatpush.bf16.msra.mxu0 %v2248
  %3096 = vmatpush.bf16.msra.mxu0 %v2245
  %3097 = vmatpush.bf16.msra.mxu0 %v2242
  %3098 = vmatpush.bf16.msra.mxu0 %v2239
  %3099 = vmatpush.bf16.msra.mxu0 %v2236
  %3100 = vmatpush.bf16.msra.mxu0 %v2233
  %3101 = vmatpush.bf16.msra.mxu0 %v2230
  %3102 = vmatmul.bf16.gmra.mxu0 %v718
  %v3103 = vpop.f32.mrf.mxu0
  %v3104 = vadd.f32 %v631, %v3103
  %v3105 = vpop.f32.mrf.mxu0
  %v3106 = vadd.f32 %v631, %v3105
  %3107 = vmatmul.bf16.gmra.mxu0 %v736
  %v3108 = vpop.f32.mrf.mxu0
  %v3109 = vadd.f32 %v631, %v3108
  %v3110 = vpop.f32.mrf.mxu0
  %3111 = vdwg.mxu0
  %3112 = vmatpush.bf16.msra.mxu0 %v2275
  %3113 = vmatpush.bf16.msra.mxu0 %v2272
  %3114 = vmatpush.bf16.msra.mxu0 %v2269
  %3115 = vmatpush.bf16.msra.mxu0 %v2266
  %3116 = vmatpush.bf16.msra.mxu0 %v2263
  %3117 = vmatpush.bf16.msra.mxu0 %v2260
  %3118 = vmatpush.bf16.msra.mxu0 %v2257
  %3119 = vmatpush.bf16.msra.mxu0 %v2254
  %3120 = vmatmul.bf16.gmra.mxu0 %v719
  %v3121 = vpop.f32.mrf.mxu0
  %v3122 = vadd.f32 %v3104, %v3121
  %v3123 = vpop.f32.mrf.mxu0
  %v3124 = vadd.f32 %v3106, %v3123
  %3125 = vmatmul.bf16.gmra.mxu0 %v737
  %v3126 = vpop.f32.mrf.mxu0
  %v3127 = vadd.f32 %v3109, %v3126
  %v3128 = vpop.f32.mrf.mxu0
  %3129 = vdwg.mxu0
  %3130 = vmatpush.bf16.msra.mxu0 %v2299
  %3131 = vmatpush.bf16.msra.mxu0 %v2296
  %3132 = vmatpush.bf16.msra.mxu0 %v2293
  %3133 = vmatpush.bf16.msra.mxu0 %v2290
  %3134 = vmatpush.bf16.msra.mxu0 %v2287
  %3135 = vmatpush.bf16.msra.mxu0 %v2284
  %3136 = vmatpush.bf16.msra.mxu0 %v2281
  %3137 = vmatpush.bf16.msra.mxu0 %v2278
  %3138 = vmatmul.bf16.gmra.mxu0 %v720
  %v3139 = vpop.f32.mrf.mxu0
  %v3140 = vadd.f32 %v3122, %v3139
  %v3141 = vpop.f32.mrf.mxu0
  %v3142 = vadd.f32 %v3124, %v3141
  %3143 = vmatmul.bf16.gmra.mxu0 %v738
  %v3144 = vpop.f32.mrf.mxu0
  %v3145 = vadd.f32 %v3127, %v3144
  %v3146 = vpop.f32.mrf.mxu0
  %3147 = vdwg.mxu0
  %3148 = vmatpush.bf16.msra.mxu0 %v2323
  %3149 = vmatpush.bf16.msra.mxu0 %v2320
  %3150 = vmatpush.bf16.msra.mxu0 %v2317
  %3151 = vmatpush.bf16.msra.mxu0 %v2314
  %3152 = vmatpush.bf16.msra.mxu0 %v2311
  %3153 = vmatpush.bf16.msra.mxu0 %v2308
  %3154 = vmatpush.bf16.msra.mxu0 %v2305
  %3155 = vmatpush.bf16.msra.mxu0 %v2302
  %3156 = vmatmul.bf16.gmra.mxu0 %v721
  %v3157 = vpop.f32.mrf.mxu0
  %v3158 = vadd.f32 %v3140, %v3157
  %v3159 = vpop.f32.mrf.mxu0
  %v3160 = vadd.f32 %v3142, %v3159
  %3161 = vmatmul.bf16.gmra.mxu0 %v739
  %v3162 = vpop.f32.mrf.mxu0
  %v3163 = vadd.f32 %v3145, %v3162
  %v3164 = vpop.f32.mrf.mxu0
  %3165 = vdwg.mxu0
  %3166 = vmatpush.bf16.msra.mxu0 %v2347
  %3167 = vmatpush.bf16.msra.mxu0 %v2344
  %3168 = vmatpush.bf16.msra.mxu0 %v2341
  %3169 = vmatpush.bf16.msra.mxu0 %v2338
  %3170 = vmatpush.bf16.msra.mxu0 %v2335
  %3171 = vmatpush.bf16.msra.mxu0 %v2332
  %3172 = vmatpush.bf16.msra.mxu0 %v2329
  %3173 = vmatpush.bf16.msra.mxu0 %v2326
  %3174 = vmatmul.bf16.gmra.mxu0 %v722
  %v3175 = vpop.f32.mrf.mxu0
  %v3176 = vadd.f32 %v3158, %v3175
  %v3177 = vpop.f32.mrf.mxu0
  %v3178 = vadd.f32 %v3160, %v3177
  %3179 = vmatmul.bf16.gmra.mxu0 %v740
  %v3180 = vpop.f32.mrf.mxu0
  %v3181 = vadd.f32 %v3163, %v3180
  %v3182 = vpop.f32.mrf.mxu0
  %3183 = vdwg.mxu0
  %3184 = vmatpush.bf16.msra.mxu0 %v2371
  %3185 = vmatpush.bf16.msra.mxu0 %v2368
  %3186 = vmatpush.bf16.msra.mxu0 %v2365
  %3187 = vmatpush.bf16.msra.mxu0 %v2362
  %3188 = vmatpush.bf16.msra.mxu0 %v2359
  %3189 = vmatpush.bf16.msra.mxu0 %v2356
  %3190 = vmatpush.bf16.msra.mxu0 %v2353
  %3191 = vmatpush.bf16.msra.mxu0 %v2350
  %3192 = vmatmul.bf16.gmra.mxu0 %v723
  %v3193 = vpop.f32.mrf.mxu0
  %v3194 = vadd.f32 %v3176, %v3193
  %v3195 = vpop.f32.mrf.mxu0
  %v3196 = vadd.f32 %v3178, %v3195
  %3197 = vmatmul.bf16.gmra.mxu0 %v741
  %v3198 = vpop.f32.mrf.mxu0
  %v3199 = vadd.f32 %v3181, %v3198
  %v3200 = vpop.f32.mrf.mxu0
  %3201 = vdwg.mxu0
  %3202 = vmatpush.bf16.msra.mxu0 %v2395
  %3203 = vmatpush.bf16.msra.mxu0 %v2392
  %3204 = vmatpush.bf16.msra.mxu0 %v2389
  %3205 = vmatpush.bf16.msra.mxu0 %v2386
  %3206 = vmatpush.bf16.msra.mxu0 %v2383
  %3207 = vmatpush.bf16.msra.mxu0 %v2380
  %3208 = vmatpush.bf16.msra.mxu0 %v2377
  %3209 = vmatpush.bf16.msra.mxu0 %v2374
  %3210 = vmatmul.bf16.gmra.mxu0 %v724
  %v3211 = vpop.f32.mrf.mxu0
  %v3212 = vadd.f32 %v3194, %v3211
  %v3213 = vpop.f32.mrf.mxu0
  %v3214 = vadd.f32 %v3196, %v3213
  %3215 = vmatmul.bf16.gmra.mxu0 %v742
  %v3216 = vpop.f32.mrf.mxu0
  %v3217 = vadd.f32 %v3199, %v3216
  %v3218 = vpop.f32.mrf.mxu0
  %3219 = vdwg.mxu0
  %3220 = vmatpush.bf16.msra.mxu0 %v2419
  %3221 = vmatpush.bf16.msra.mxu0 %v2416
  %3222 = vmatpush.bf16.msra.mxu0 %v2413
  %3223 = vmatpush.bf16.msra.mxu0 %v2410
  %3224 = vmatpush.bf16.msra.mxu0 %v2407
  %3225 = vmatpush.bf16.msra.mxu0 %v2404
  %3226 = vmatpush.bf16.msra.mxu0 %v2401
  %3227 = vmatpush.bf16.msra.mxu0 %v2398
  %3228 = vmatmul.bf16.gmra.mxu0 %v725
  %v3229 = vpop.f32.mrf.mxu0
  %v3230 = vadd.f32 %v3212, %v3229
  %v3231 = vpop.f32.mrf.mxu0
  %v3232 = vadd.f32 %v3214, %v3231
  %3233 = vmatmul.bf16.gmra.mxu0 %v743
  %v3234 = vpop.f32.mrf.mxu0
  %v3235 = vadd.f32 %v3217, %v3234
  %v3236 = vpop.f32.mrf.mxu0
  %3237 = vdwg.mxu0
  %3238 = vmatpush.bf16.msra.mxu0 %v2443
  %3239 = vmatpush.bf16.msra.mxu0 %v2440
  %3240 = vmatpush.bf16.msra.mxu0 %v2437
  %3241 = vmatpush.bf16.msra.mxu0 %v2434
  %3242 = vmatpush.bf16.msra.mxu0 %v2431
  %3243 = vmatpush.bf16.msra.mxu0 %v2428
  %3244 = vmatpush.bf16.msra.mxu0 %v2425
  %3245 = vmatpush.bf16.msra.mxu0 %v2422
  %3246 = vmatmul.bf16.gmra.mxu0 %v726
  %v3247 = vpop.f32.mrf.mxu0
  %v3248 = vadd.f32 %v3230, %v3247
  %v3249 = vpop.f32.mrf.mxu0
  %v3250 = vadd.f32 %v3232, %v3249
  %3251 = vmatmul.bf16.gmra.mxu0 %v744
  %v3252 = vpop.f32.mrf.mxu0
  %v3253 = vadd.f32 %v3235, %v3252
  %v3254 = vpop.f32.mrf.mxu0
  %3255 = vdwg.mxu0
  %3256 = vmatpush.bf16.msra.mxu0 %v2467
  %3257 = vmatpush.bf16.msra.mxu0 %v2464
  %3258 = vmatpush.bf16.msra.mxu0 %v2461
  %3259 = vmatpush.bf16.msra.mxu0 %v2458
  %3260 = vmatpush.bf16.msra.mxu0 %v2455
  %3261 = vmatpush.bf16.msra.mxu0 %v2452
  %3262 = vmatpush.bf16.msra.mxu0 %v2449
  %3263 = vmatpush.bf16.msra.mxu0 %v2446
  %3264 = vmatmul.bf16.gmra.mxu0 %v727
  %v3265 = vpop.f32.mrf.mxu0
  %v3266 = vadd.f32 %v3248, %v3265
  %v3267 = vpop.f32.mrf.mxu0
  %v3268 = vadd.f32 %v3250, %v3267
  %3269 = vmatmul.bf16.gmra.mxu0 %v745
  %v3270 = vpop.f32.mrf.mxu0
  %v3271 = vadd.f32 %v3253, %v3270
  %v3272 = vpop.f32.mrf.mxu0
  %3273 = vdwg.mxu0
  %3274 = vmatpush.bf16.msra.mxu0 %v2491
  %3275 = vmatpush.bf16.msra.mxu0 %v2488
  %3276 = vmatpush.bf16.msra.mxu0 %v2485
  %3277 = vmatpush.bf16.msra.mxu0 %v2482
  %3278 = vmatpush.bf16.msra.mxu0 %v2479
  %3279 = vmatpush.bf16.msra.mxu0 %v2476
  %3280 = vmatpush.bf16.msra.mxu0 %v2473
  %3281 = vmatpush.bf16.msra.mxu0 %v2470
  %3282 = vmatmul.bf16.gmra.mxu0 %v728
  %v3283 = vpop.f32.mrf.mxu0
  %v3284 = vadd.f32 %v3266, %v3283
  %v3285 = vpop.f32.mrf.mxu0
  %v3286 = vadd.f32 %v3268, %v3285
  %3287 = vmatmul.bf16.gmra.mxu0 %v746
  %v3288 = vpop.f32.mrf.mxu0
  %v3289 = vadd.f32 %v3271, %v3288
  %v3290 = vpop.f32.mrf.mxu0
  %3291 = vdwg.mxu0
  %3292 = vmatpush.bf16.msra.mxu0 %v2515
  %3293 = vmatpush.bf16.msra.mxu0 %v2512
  %3294 = vmatpush.bf16.msra.mxu0 %v2509
  %3295 = vmatpush.bf16.msra.mxu0 %v2506
  %3296 = vmatpush.bf16.msra.mxu0 %v2503
  %3297 = vmatpush.bf16.msra.mxu0 %v2500
  %3298 = vmatpush.bf16.msra.mxu0 %v2497
  %3299 = vmatpush.bf16.msra.mxu0 %v2494
  %3300 = vmatmul.bf16.gmra.mxu0 %v729
  %v3301 = vpop.f32.mrf.mxu0
  %v3302 = vadd.f32 %v3284, %v3301
  %v3303 = vpop.f32.mrf.mxu0
  %v3304 = vadd.f32 %v3286, %v3303
  %3305 = vmatmul.bf16.gmra.mxu0 %v747
  %v3306 = vpop.f32.mrf.mxu0
  %v3307 = vadd.f32 %v3289, %v3306
  %v3308 = vpop.f32.mrf.mxu0
  %3309 = vdwg.mxu0
  %3310 = vmatpush.bf16.msra.mxu0 %v2539
  %3311 = vmatpush.bf16.msra.mxu0 %v2536
  %3312 = vmatpush.bf16.msra.mxu0 %v2533
  %3313 = vmatpush.bf16.msra.mxu0 %v2530
  %3314 = vmatpush.bf16.msra.mxu0 %v2527
  %3315 = vmatpush.bf16.msra.mxu0 %v2524
  %3316 = vmatpush.bf16.msra.mxu0 %v2521
  %3317 = vmatpush.bf16.msra.mxu0 %v2518
  %3318 = vmatmul.bf16.gmra.mxu0 %v730
  %v3319 = vpop.f32.mrf.mxu0
  %v3320 = vadd.f32 %v3302, %v3319
  %v3321 = vpop.f32.mrf.mxu0
  %v3322 = vadd.f32 %v3304, %v3321
  %3323 = vmatmul.bf16.gmra.mxu0 %v748
  %v3324 = vpop.f32.mrf.mxu0
  %v3325 = vadd.f32 %v3307, %v3324
  %v3326 = vpop.f32.mrf.mxu0
  %3327 = vdwg.mxu0
  %3328 = vmatpush.bf16.msra.mxu0 %v2563
  %3329 = vmatpush.bf16.msra.mxu0 %v2560
  %3330 = vmatpush.bf16.msra.mxu0 %v2557
  %3331 = vmatpush.bf16.msra.mxu0 %v2554
  %3332 = vmatpush.bf16.msra.mxu0 %v2551
  %3333 = vmatpush.bf16.msra.mxu0 %v2548
  %3334 = vmatpush.bf16.msra.mxu0 %v2545
  %3335 = vmatpush.bf16.msra.mxu0 %v2542
  %3336 = vmatmul.bf16.gmra.mxu0 %v731
  %v3337 = vpop.f32.mrf.mxu0
  %v3338 = vadd.f32 %v3320, %v3337
  %v3339 = vpop.f32.mrf.mxu0
  %v3340 = vadd.f32 %v3322, %v3339
  %3341 = vmatmul.bf16.gmra.mxu0 %v749
  %v3342 = vpop.f32.mrf.mxu0
  %v3343 = vadd.f32 %v3325, %v3342
  %v3344 = vpop.f32.mrf.mxu0
  %3345 = vdwg.mxu0
  %3346 = vmatpush.bf16.msra.mxu0 %v2587
  %3347 = vmatpush.bf16.msra.mxu0 %v2584
  %3348 = vmatpush.bf16.msra.mxu0 %v2581
  %3349 = vmatpush.bf16.msra.mxu0 %v2578
  %3350 = vmatpush.bf16.msra.mxu0 %v2575
  %3351 = vmatpush.bf16.msra.mxu0 %v2572
  %3352 = vmatpush.bf16.msra.mxu0 %v2569
  %3353 = vmatpush.bf16.msra.mxu0 %v2566
  %3354 = vmatmul.bf16.gmra.mxu0 %v732
  %v3355 = vpop.f32.mrf.mxu0
  %v3356 = vadd.f32 %v3338, %v3355
  %v3357 = vpop.f32.mrf.mxu0
  %v3358 = vadd.f32 %v3340, %v3357
  %3359 = vmatmul.bf16.gmra.mxu0 %v750
  %v3360 = vpop.f32.mrf.mxu0
  %v3361 = vadd.f32 %v3343, %v3360
  %v3362 = vpop.f32.mrf.mxu0
  %3363 = vdwg.mxu0
  %3364 = vmatpush.bf16.msra.mxu0 %v2611
  %3365 = vmatpush.bf16.msra.mxu0 %v2608
  %3366 = vmatpush.bf16.msra.mxu0 %v2605
  %3367 = vmatpush.bf16.msra.mxu0 %v2602
  %3368 = vmatpush.bf16.msra.mxu0 %v2599
  %3369 = vmatpush.bf16.msra.mxu0 %v2596
  %3370 = vmatpush.bf16.msra.mxu0 %v2593
  %3371 = vmatpush.bf16.msra.mxu0 %v2590
  %3372 = vmatmul.bf16.gmra.mxu0 %v733
  %v3373 = vpop.f32.mrf.mxu0
  %v3374 = vadd.f32 %v3356, %v3373
  %v3375 = vpop.f32.mrf.mxu0
  %v3376 = vadd.f32 %v3358, %v3375
  %3377 = vmatmul.bf16.gmra.mxu0 %v751
  %v3378 = vpop.f32.mrf.mxu0
  %v3379 = vadd.f32 %v3361, %v3378
  %v3380 = vpop.f32.mrf.mxu0
  %3381 = vdwg.mxu0
  %3382 = vmatpush.bf16.msra.mxu0 %v2635
  %3383 = vmatpush.bf16.msra.mxu0 %v2632
  %3384 = vmatpush.bf16.msra.mxu0 %v2629
  %3385 = vmatpush.bf16.msra.mxu0 %v2626
  %3386 = vmatpush.bf16.msra.mxu0 %v2623
  %3387 = vmatpush.bf16.msra.mxu0 %v2620
  %3388 = vmatpush.bf16.msra.mxu0 %v2617
  %3389 = vmatpush.bf16.msra.mxu0 %v2614
  %3390 = vmatmul.bf16.gmra.mxu0 %v734
  %v3391 = vpop.f32.mrf.mxu0
  %v3392 = vadd.f32 %v3374, %v3391
  %v3393 = vpop.f32.mrf.mxu0
  %v3394 = vadd.f32 %v3376, %v3393
  %3395 = vmatmul.bf16.gmra.mxu0 %v752
  %v3396 = vpop.f32.mrf.mxu0
  %v3397 = vadd.f32 %v3379, %v3396
  %v3398 = vpop.f32.mrf.mxu0
  %3399 = vdwg.mxu0
  %3400 = vmatpush.bf16.msra.mxu0 %v2659
  %3401 = vmatpush.bf16.msra.mxu0 %v2656
  %3402 = vmatpush.bf16.msra.mxu0 %v2653
  %3403 = vmatpush.bf16.msra.mxu0 %v2650
  %3404 = vmatpush.bf16.msra.mxu0 %v2647
  %3405 = vmatpush.bf16.msra.mxu0 %v2644
  %3406 = vmatpush.bf16.msra.mxu0 %v2641
  %3407 = vmatpush.bf16.msra.mxu0 %v2638
  %3408 = vmatmul.bf16.gmra.mxu0 %v735
  %v3409 = vpop.f32.mrf.mxu0
  %v3410 = vadd.f32 %v3392, %v3409
  %v3411 = vpop.f32.mrf.mxu0
  %v3412 = vadd.f32 %v3394, %v3411
  %3413 = vmatmul.bf16.gmra.mxu0 %v753
  %v3414 = vpop.f32.mrf.mxu0
  %v3415 = vadd.f32 %v3397, %v3414
  %v3416 = vpop.f32.mrf.mxu0
  %3417 = vdwg.mxu0
  %3418 = vmatpush.bf16.msra.mxu0 %v2252
  %3419 = vmatpush.bf16.msra.mxu0 %v2249
  %3420 = vmatpush.bf16.msra.mxu0 %v2246
  %3421 = vmatpush.bf16.msra.mxu0 %v2243
  %3422 = vmatpush.bf16.msra.mxu0 %v2240
  %3423 = vmatpush.bf16.msra.mxu0 %v2237
  %3424 = vmatpush.bf16.msra.mxu0 %v2234
  %3425 = vmatpush.bf16.msra.mxu0 %v2231
  %3426 = vmatmul.bf16.gmra.mxu0 %v718
  %v3427 = vpop.f32.mrf.mxu0
  %v3428 = vadd.f32 %v632, %v3427
  %v3429 = vpop.f32.mrf.mxu0
  %v3430 = vadd.f32 %v632, %v3429
  %3431 = vmatmul.bf16.gmra.mxu0 %v736
  %v3432 = vpop.f32.mrf.mxu0
  %v3433 = vadd.f32 %v632, %v3432
  %v3434 = vpop.f32.mrf.mxu0
  %3435 = vdwg.mxu0
  %3436 = vmatpush.bf16.msra.mxu0 %v2276
  %3437 = vmatpush.bf16.msra.mxu0 %v2273
  %3438 = vmatpush.bf16.msra.mxu0 %v2270
  %3439 = vmatpush.bf16.msra.mxu0 %v2267
  %3440 = vmatpush.bf16.msra.mxu0 %v2264
  %3441 = vmatpush.bf16.msra.mxu0 %v2261
  %3442 = vmatpush.bf16.msra.mxu0 %v2258
  %3443 = vmatpush.bf16.msra.mxu0 %v2255
  %3444 = vmatmul.bf16.gmra.mxu0 %v719
  %v3445 = vpop.f32.mrf.mxu0
  %v3446 = vadd.f32 %v3428, %v3445
  %v3447 = vpop.f32.mrf.mxu0
  %v3448 = vadd.f32 %v3430, %v3447
  %3449 = vmatmul.bf16.gmra.mxu0 %v737
  %v3450 = vpop.f32.mrf.mxu0
  %v3451 = vadd.f32 %v3433, %v3450
  %v3452 = vpop.f32.mrf.mxu0
  %3453 = vdwg.mxu0
  %3454 = vmatpush.bf16.msra.mxu0 %v2300
  %3455 = vmatpush.bf16.msra.mxu0 %v2297
  %3456 = vmatpush.bf16.msra.mxu0 %v2294
  %3457 = vmatpush.bf16.msra.mxu0 %v2291
  %3458 = vmatpush.bf16.msra.mxu0 %v2288
  %3459 = vmatpush.bf16.msra.mxu0 %v2285
  %3460 = vmatpush.bf16.msra.mxu0 %v2282
  %3461 = vmatpush.bf16.msra.mxu0 %v2279
  %3462 = vmatmul.bf16.gmra.mxu0 %v720
  %v3463 = vpop.f32.mrf.mxu0
  %v3464 = vadd.f32 %v3446, %v3463
  %v3465 = vpop.f32.mrf.mxu0
  %v3466 = vadd.f32 %v3448, %v3465
  %3467 = vmatmul.bf16.gmra.mxu0 %v738
  %v3468 = vpop.f32.mrf.mxu0
  %v3469 = vadd.f32 %v3451, %v3468
  %v3470 = vpop.f32.mrf.mxu0
  %3471 = vdwg.mxu0
  %3472 = vmatpush.bf16.msra.mxu0 %v2324
  %3473 = vmatpush.bf16.msra.mxu0 %v2321
  %3474 = vmatpush.bf16.msra.mxu0 %v2318
  %3475 = vmatpush.bf16.msra.mxu0 %v2315
  %3476 = vmatpush.bf16.msra.mxu0 %v2312
  %3477 = vmatpush.bf16.msra.mxu0 %v2309
  %3478 = vmatpush.bf16.msra.mxu0 %v2306
  %3479 = vmatpush.bf16.msra.mxu0 %v2303
  %3480 = vmatmul.bf16.gmra.mxu0 %v721
  %v3481 = vpop.f32.mrf.mxu0
  %v3482 = vadd.f32 %v3464, %v3481
  %v3483 = vpop.f32.mrf.mxu0
  %v3484 = vadd.f32 %v3466, %v3483
  %3485 = vmatmul.bf16.gmra.mxu0 %v739
  %v3486 = vpop.f32.mrf.mxu0
  %v3487 = vadd.f32 %v3469, %v3486
  %v3488 = vpop.f32.mrf.mxu0
  %3489 = vdwg.mxu0
  %3490 = vmatpush.bf16.msra.mxu0 %v2348
  %3491 = vmatpush.bf16.msra.mxu0 %v2345
  %3492 = vmatpush.bf16.msra.mxu0 %v2342
  %3493 = vmatpush.bf16.msra.mxu0 %v2339
  %3494 = vmatpush.bf16.msra.mxu0 %v2336
  %3495 = vmatpush.bf16.msra.mxu0 %v2333
  %3496 = vmatpush.bf16.msra.mxu0 %v2330
  %3497 = vmatpush.bf16.msra.mxu0 %v2327
  %3498 = vmatmul.bf16.gmra.mxu0 %v722
  %v3499 = vpop.f32.mrf.mxu0
  %v3500 = vadd.f32 %v3482, %v3499
  %v3501 = vpop.f32.mrf.mxu0
  %v3502 = vadd.f32 %v3484, %v3501
  %3503 = vmatmul.bf16.gmra.mxu0 %v740
  %v3504 = vpop.f32.mrf.mxu0
  %v3505 = vadd.f32 %v3487, %v3504
  %v3506 = vpop.f32.mrf.mxu0
  %3507 = vdwg.mxu0
  %3508 = vmatpush.bf16.msra.mxu0 %v2372
  %3509 = vmatpush.bf16.msra.mxu0 %v2369
  %3510 = vmatpush.bf16.msra.mxu0 %v2366
  %3511 = vmatpush.bf16.msra.mxu0 %v2363
  %3512 = vmatpush.bf16.msra.mxu0 %v2360
  %3513 = vmatpush.bf16.msra.mxu0 %v2357
  %3514 = vmatpush.bf16.msra.mxu0 %v2354
  %3515 = vmatpush.bf16.msra.mxu0 %v2351
  %3516 = vmatmul.bf16.gmra.mxu0 %v723
  %v3517 = vpop.f32.mrf.mxu0
  %v3518 = vadd.f32 %v3500, %v3517
  %v3519 = vpop.f32.mrf.mxu0
  %v3520 = vadd.f32 %v3502, %v3519
  %3521 = vmatmul.bf16.gmra.mxu0 %v741
  %v3522 = vpop.f32.mrf.mxu0
  %v3523 = vadd.f32 %v3505, %v3522
  %v3524 = vpop.f32.mrf.mxu0
  %3525 = vdwg.mxu0
  %3526 = vmatpush.bf16.msra.mxu0 %v2396
  %3527 = vmatpush.bf16.msra.mxu0 %v2393
  %3528 = vmatpush.bf16.msra.mxu0 %v2390
  %3529 = vmatpush.bf16.msra.mxu0 %v2387
  %3530 = vmatpush.bf16.msra.mxu0 %v2384
  %3531 = vmatpush.bf16.msra.mxu0 %v2381
  %3532 = vmatpush.bf16.msra.mxu0 %v2378
  %3533 = vmatpush.bf16.msra.mxu0 %v2375
  %3534 = vmatmul.bf16.gmra.mxu0 %v724
  %v3535 = vpop.f32.mrf.mxu0
  %v3536 = vadd.f32 %v3518, %v3535
  %v3537 = vpop.f32.mrf.mxu0
  %v3538 = vadd.f32 %v3520, %v3537
  %3539 = vmatmul.bf16.gmra.mxu0 %v742
  %v3540 = vpop.f32.mrf.mxu0
  %v3541 = vadd.f32 %v3523, %v3540
  %v3542 = vpop.f32.mrf.mxu0
  %3543 = vdwg.mxu0
  %3544 = vmatpush.bf16.msra.mxu0 %v2420
  %3545 = vmatpush.bf16.msra.mxu0 %v2417
  %3546 = vmatpush.bf16.msra.mxu0 %v2414
  %3547 = vmatpush.bf16.msra.mxu0 %v2411
  %3548 = vmatpush.bf16.msra.mxu0 %v2408
  %3549 = vmatpush.bf16.msra.mxu0 %v2405
  %3550 = vmatpush.bf16.msra.mxu0 %v2402
  %3551 = vmatpush.bf16.msra.mxu0 %v2399
  %3552 = vmatmul.bf16.gmra.mxu0 %v725
  %v3553 = vpop.f32.mrf.mxu0
  %v3554 = vadd.f32 %v3536, %v3553
  %v3555 = vpop.f32.mrf.mxu0
  %v3556 = vadd.f32 %v3538, %v3555
  %3557 = vmatmul.bf16.gmra.mxu0 %v743
  %v3558 = vpop.f32.mrf.mxu0
  %v3559 = vadd.f32 %v3541, %v3558
  %v3560 = vpop.f32.mrf.mxu0
  %3561 = vdwg.mxu0
  %3562 = vmatpush.bf16.msra.mxu0 %v2444
  %3563 = vmatpush.bf16.msra.mxu0 %v2441
  %3564 = vmatpush.bf16.msra.mxu0 %v2438
  %3565 = vmatpush.bf16.msra.mxu0 %v2435
  %3566 = vmatpush.bf16.msra.mxu0 %v2432
  %3567 = vmatpush.bf16.msra.mxu0 %v2429
  %3568 = vmatpush.bf16.msra.mxu0 %v2426
  %3569 = vmatpush.bf16.msra.mxu0 %v2423
  %3570 = vmatmul.bf16.gmra.mxu0 %v726
  %v3571 = vpop.f32.mrf.mxu0
  %v3572 = vadd.f32 %v3554, %v3571
  %v3573 = vpop.f32.mrf.mxu0
  %v3574 = vadd.f32 %v3556, %v3573
  %3575 = vmatmul.bf16.gmra.mxu0 %v744
  %v3576 = vpop.f32.mrf.mxu0
  %v3577 = vadd.f32 %v3559, %v3576
  %v3578 = vpop.f32.mrf.mxu0
  %3579 = vdwg.mxu0
  %3580 = vmatpush.bf16.msra.mxu0 %v2468
  %3581 = vmatpush.bf16.msra.mxu0 %v2465
  %3582 = vmatpush.bf16.msra.mxu0 %v2462
  %3583 = vmatpush.bf16.msra.mxu0 %v2459
  %3584 = vmatpush.bf16.msra.mxu0 %v2456
  %3585 = vmatpush.bf16.msra.mxu0 %v2453
  %3586 = vmatpush.bf16.msra.mxu0 %v2450
  %3587 = vmatpush.bf16.msra.mxu0 %v2447
  %3588 = vmatmul.bf16.gmra.mxu0 %v727
  %v3589 = vpop.f32.mrf.mxu0
  %v3590 = vadd.f32 %v3572, %v3589
  %v3591 = vpop.f32.mrf.mxu0
  %v3592 = vadd.f32 %v3574, %v3591
  %3593 = vmatmul.bf16.gmra.mxu0 %v745
  %v3594 = vpop.f32.mrf.mxu0
  %v3595 = vadd.f32 %v3577, %v3594
  %v3596 = vpop.f32.mrf.mxu0
  %3597 = vdwg.mxu0
  %3598 = vmatpush.bf16.msra.mxu0 %v2492
  %3599 = vmatpush.bf16.msra.mxu0 %v2489
  %3600 = vmatpush.bf16.msra.mxu0 %v2486
  %3601 = vmatpush.bf16.msra.mxu0 %v2483
  %3602 = vmatpush.bf16.msra.mxu0 %v2480
  %3603 = vmatpush.bf16.msra.mxu0 %v2477
  %3604 = vmatpush.bf16.msra.mxu0 %v2474
  %3605 = vmatpush.bf16.msra.mxu0 %v2471
  %3606 = vmatmul.bf16.gmra.mxu0 %v728
  %v3607 = vpop.f32.mrf.mxu0
  %v3608 = vadd.f32 %v3590, %v3607
  %v3609 = vpop.f32.mrf.mxu0
  %v3610 = vadd.f32 %v3592, %v3609
  %3611 = vmatmul.bf16.gmra.mxu0 %v746
  %v3612 = vpop.f32.mrf.mxu0
  %v3613 = vadd.f32 %v3595, %v3612
  %v3614 = vpop.f32.mrf.mxu0
  %3615 = vdwg.mxu0
  %3616 = vmatpush.bf16.msra.mxu0 %v2516
  %3617 = vmatpush.bf16.msra.mxu0 %v2513
  %3618 = vmatpush.bf16.msra.mxu0 %v2510
  %3619 = vmatpush.bf16.msra.mxu0 %v2507
  %3620 = vmatpush.bf16.msra.mxu0 %v2504
  %3621 = vmatpush.bf16.msra.mxu0 %v2501
  %3622 = vmatpush.bf16.msra.mxu0 %v2498
  %3623 = vmatpush.bf16.msra.mxu0 %v2495
  %3624 = vmatmul.bf16.gmra.mxu0 %v729
  %v3625 = vpop.f32.mrf.mxu0
  %v3626 = vadd.f32 %v3608, %v3625
  %v3627 = vpop.f32.mrf.mxu0
  %v3628 = vadd.f32 %v3610, %v3627
  %3629 = vmatmul.bf16.gmra.mxu0 %v747
  %v3630 = vpop.f32.mrf.mxu0
  %v3631 = vadd.f32 %v3613, %v3630
  %v3632 = vpop.f32.mrf.mxu0
  %3633 = vdwg.mxu0
  %3634 = vmatpush.bf16.msra.mxu0 %v2540
  %3635 = vmatpush.bf16.msra.mxu0 %v2537
  %3636 = vmatpush.bf16.msra.mxu0 %v2534
  %3637 = vmatpush.bf16.msra.mxu0 %v2531
  %3638 = vmatpush.bf16.msra.mxu0 %v2528
  %3639 = vmatpush.bf16.msra.mxu0 %v2525
  %3640 = vmatpush.bf16.msra.mxu0 %v2522
  %3641 = vmatpush.bf16.msra.mxu0 %v2519
  %3642 = vmatmul.bf16.gmra.mxu0 %v730
  %v3643 = vpop.f32.mrf.mxu0
  %v3644 = vadd.f32 %v3626, %v3643
  %v3645 = vpop.f32.mrf.mxu0
  %v3646 = vadd.f32 %v3628, %v3645
  %3647 = vmatmul.bf16.gmra.mxu0 %v748
  %v3648 = vpop.f32.mrf.mxu0
  %v3649 = vadd.f32 %v3631, %v3648
  %v3650 = vpop.f32.mrf.mxu0
  %3651 = vdwg.mxu0
  %3652 = vmatpush.bf16.msra.mxu0 %v2564
  %3653 = vmatpush.bf16.msra.mxu0 %v2561
  %3654 = vmatpush.bf16.msra.mxu0 %v2558
  %3655 = vmatpush.bf16.msra.mxu0 %v2555
  %3656 = vmatpush.bf16.msra.mxu0 %v2552
  %3657 = vmatpush.bf16.msra.mxu0 %v2549
  %3658 = vmatpush.bf16.msra.mxu0 %v2546
  %3659 = vmatpush.bf16.msra.mxu0 %v2543
  %3660 = vmatmul.bf16.gmra.mxu0 %v731
  %v3661 = vpop.f32.mrf.mxu0
  %v3662 = vadd.f32 %v3644, %v3661
  %v3663 = vpop.f32.mrf.mxu0
  %v3664 = vadd.f32 %v3646, %v3663
  %3665 = vmatmul.bf16.gmra.mxu0 %v749
  %v3666 = vpop.f32.mrf.mxu0
  %v3667 = vadd.f32 %v3649, %v3666
  %v3668 = vpop.f32.mrf.mxu0
  %3669 = vdwg.mxu0
  %3670 = vmatpush.bf16.msra.mxu0 %v2588
  %3671 = vmatpush.bf16.msra.mxu0 %v2585
  %3672 = vmatpush.bf16.msra.mxu0 %v2582
  %3673 = vmatpush.bf16.msra.mxu0 %v2579
  %3674 = vmatpush.bf16.msra.mxu0 %v2576
  %3675 = vmatpush.bf16.msra.mxu0 %v2573
  %3676 = vmatpush.bf16.msra.mxu0 %v2570
  %3677 = vmatpush.bf16.msra.mxu0 %v2567
  %3678 = vmatmul.bf16.gmra.mxu0 %v732
  %v3679 = vpop.f32.mrf.mxu0
  %v3680 = vadd.f32 %v3662, %v3679
  %v3681 = vpop.f32.mrf.mxu0
  %v3682 = vadd.f32 %v3664, %v3681
  %3683 = vmatmul.bf16.gmra.mxu0 %v750
  %v3684 = vpop.f32.mrf.mxu0
  %v3685 = vadd.f32 %v3667, %v3684
  %v3686 = vpop.f32.mrf.mxu0
  %3687 = vdwg.mxu0
  %3688 = vmatpush.bf16.msra.mxu0 %v2612
  %3689 = vmatpush.bf16.msra.mxu0 %v2609
  %3690 = vmatpush.bf16.msra.mxu0 %v2606
  %3691 = vmatpush.bf16.msra.mxu0 %v2603
  %3692 = vmatpush.bf16.msra.mxu0 %v2600
  %3693 = vmatpush.bf16.msra.mxu0 %v2597
  %3694 = vmatpush.bf16.msra.mxu0 %v2594
  %3695 = vmatpush.bf16.msra.mxu0 %v2591
  %3696 = vmatmul.bf16.gmra.mxu0 %v733
  %v3697 = vpop.f32.mrf.mxu0
  %v3698 = vadd.f32 %v3680, %v3697
  %v3699 = vpop.f32.mrf.mxu0
  %v3700 = vadd.f32 %v3682, %v3699
  %3701 = vmatmul.bf16.gmra.mxu0 %v751
  %v3702 = vpop.f32.mrf.mxu0
  %v3703 = vadd.f32 %v3685, %v3702
  %v3704 = vpop.f32.mrf.mxu0
  %3705 = vdwg.mxu0
  %3706 = vmatpush.bf16.msra.mxu0 %v2636
  %3707 = vmatpush.bf16.msra.mxu0 %v2633
  %3708 = vmatpush.bf16.msra.mxu0 %v2630
  %3709 = vmatpush.bf16.msra.mxu0 %v2627
  %3710 = vmatpush.bf16.msra.mxu0 %v2624
  %3711 = vmatpush.bf16.msra.mxu0 %v2621
  %3712 = vmatpush.bf16.msra.mxu0 %v2618
  %3713 = vmatpush.bf16.msra.mxu0 %v2615
  %3714 = vmatmul.bf16.gmra.mxu0 %v734
  %v3715 = vpop.f32.mrf.mxu0
  %v3716 = vadd.f32 %v3698, %v3715
  %v3717 = vpop.f32.mrf.mxu0
  %v3718 = vadd.f32 %v3700, %v3717
  %3719 = vmatmul.bf16.gmra.mxu0 %v752
  %v3720 = vpop.f32.mrf.mxu0
  %v3721 = vadd.f32 %v3703, %v3720
  %v3722 = vpop.f32.mrf.mxu0
  %3723 = vdwg.mxu0
  %3724 = vmatpush.bf16.msra.mxu0 %v2660
  %3725 = vmatpush.bf16.msra.mxu0 %v2657
  %3726 = vmatpush.bf16.msra.mxu0 %v2654
  %3727 = vmatpush.bf16.msra.mxu0 %v2651
  %3728 = vmatpush.bf16.msra.mxu0 %v2648
  %3729 = vmatpush.bf16.msra.mxu0 %v2645
  %3730 = vmatpush.bf16.msra.mxu0 %v2642
  %3731 = vmatpush.bf16.msra.mxu0 %v2639
  %3732 = vmatmul.bf16.gmra.mxu0 %v735
  %v3733 = vpop.f32.mrf.mxu0
  %v3734 = vadd.f32 %v3716, %v3733
  %v3735 = vpop.f32.mrf.mxu0
  %v3736 = vadd.f32 %v3718, %v3735
  %3737 = vmatmul.bf16.gmra.mxu0 %v753
  %v3738 = vpop.f32.mrf.mxu0
  %v3739 = vadd.f32 %v3721, %v3738
  %v3740 = vpop.f32.mrf.mxu0
  %3741 = vdwg.mxu0
  %3742 = vmatpush.bf16.msra.mxu0 %v2253
  %3743 = vmatpush.bf16.msra.mxu0 %v2250
  %3744 = vmatpush.bf16.msra.mxu0 %v2247
  %3745 = vmatpush.bf16.msra.mxu0 %v2244
  %3746 = vmatpush.bf16.msra.mxu0 %v2241
  %3747 = vmatpush.bf16.msra.mxu0 %v2238
  %3748 = vmatpush.bf16.msra.mxu0 %v2235
  %3749 = vmatpush.bf16.msra.mxu0 %v2232
  %3750 = vmatmul.bf16.gmra.mxu0 %v718
  %v3751 = vpop.f32.mrf.mxu0
  %v3752 = vadd.f32 %v633, %v3751
  %v3753 = vpop.f32.mrf.mxu0
  %v3754 = vadd.f32 %v633, %v3753
  %3755 = vmatmul.bf16.gmra.mxu0 %v736
  %v3756 = vpop.f32.mrf.mxu0
  %v3757 = vadd.f32 %v633, %v3756
  %v3758 = vpop.f32.mrf.mxu0
  %3759 = vdwg.mxu0
  %3760 = vmatpush.bf16.msra.mxu0 %v2277
  %3761 = vmatpush.bf16.msra.mxu0 %v2274
  %3762 = vmatpush.bf16.msra.mxu0 %v2271
  %3763 = vmatpush.bf16.msra.mxu0 %v2268
  %3764 = vmatpush.bf16.msra.mxu0 %v2265
  %3765 = vmatpush.bf16.msra.mxu0 %v2262
  %3766 = vmatpush.bf16.msra.mxu0 %v2259
  %3767 = vmatpush.bf16.msra.mxu0 %v2256
  %3768 = vmatmul.bf16.gmra.mxu0 %v719
  %v3769 = vpop.f32.mrf.mxu0
  %v3770 = vadd.f32 %v3752, %v3769
  %v3771 = vpop.f32.mrf.mxu0
  %v3772 = vadd.f32 %v3754, %v3771
  %3773 = vmatmul.bf16.gmra.mxu0 %v737
  %v3774 = vpop.f32.mrf.mxu0
  %v3775 = vadd.f32 %v3757, %v3774
  %v3776 = vpop.f32.mrf.mxu0
  %3777 = vdwg.mxu0
  %3778 = vmatpush.bf16.msra.mxu0 %v2301
  %3779 = vmatpush.bf16.msra.mxu0 %v2298
  %3780 = vmatpush.bf16.msra.mxu0 %v2295
  %3781 = vmatpush.bf16.msra.mxu0 %v2292
  %3782 = vmatpush.bf16.msra.mxu0 %v2289
  %3783 = vmatpush.bf16.msra.mxu0 %v2286
  %3784 = vmatpush.bf16.msra.mxu0 %v2283
  %3785 = vmatpush.bf16.msra.mxu0 %v2280
  %3786 = vmatmul.bf16.gmra.mxu0 %v720
  %v3787 = vpop.f32.mrf.mxu0
  %v3788 = vadd.f32 %v3770, %v3787
  %v3789 = vpop.f32.mrf.mxu0
  %v3790 = vadd.f32 %v3772, %v3789
  %3791 = vmatmul.bf16.gmra.mxu0 %v738
  %v3792 = vpop.f32.mrf.mxu0
  %v3793 = vadd.f32 %v3775, %v3792
  %v3794 = vpop.f32.mrf.mxu0
  %3795 = vdwg.mxu0
  %3796 = vmatpush.bf16.msra.mxu0 %v2325
  %3797 = vmatpush.bf16.msra.mxu0 %v2322
  %3798 = vmatpush.bf16.msra.mxu0 %v2319
  %3799 = vmatpush.bf16.msra.mxu0 %v2316
  %3800 = vmatpush.bf16.msra.mxu0 %v2313
  %3801 = vmatpush.bf16.msra.mxu0 %v2310
  %3802 = vmatpush.bf16.msra.mxu0 %v2307
  %3803 = vmatpush.bf16.msra.mxu0 %v2304
  %3804 = vmatmul.bf16.gmra.mxu0 %v721
  %v3805 = vpop.f32.mrf.mxu0
  %v3806 = vadd.f32 %v3788, %v3805
  %v3807 = vpop.f32.mrf.mxu0
  %v3808 = vadd.f32 %v3790, %v3807
  %3809 = vmatmul.bf16.gmra.mxu0 %v739
  %v3810 = vpop.f32.mrf.mxu0
  %v3811 = vadd.f32 %v3793, %v3810
  %v3812 = vpop.f32.mrf.mxu0
  %3813 = vdwg.mxu0
  %3814 = vmatpush.bf16.msra.mxu0 %v2349
  %3815 = vmatpush.bf16.msra.mxu0 %v2346
  %3816 = vmatpush.bf16.msra.mxu0 %v2343
  %3817 = vmatpush.bf16.msra.mxu0 %v2340
  %3818 = vmatpush.bf16.msra.mxu0 %v2337
  %3819 = vmatpush.bf16.msra.mxu0 %v2334
  %3820 = vmatpush.bf16.msra.mxu0 %v2331
  %3821 = vmatpush.bf16.msra.mxu0 %v2328
  %3822 = vmatmul.bf16.gmra.mxu0 %v722
  %v3823 = vpop.f32.mrf.mxu0
  %v3824 = vadd.f32 %v3806, %v3823
  %v3825 = vpop.f32.mrf.mxu0
  %v3826 = vadd.f32 %v3808, %v3825
  %3827 = vmatmul.bf16.gmra.mxu0 %v740
  %v3828 = vpop.f32.mrf.mxu0
  %v3829 = vadd.f32 %v3811, %v3828
  %v3830 = vpop.f32.mrf.mxu0
  %3831 = vdwg.mxu0
  %3832 = vmatpush.bf16.msra.mxu0 %v2373
  %3833 = vmatpush.bf16.msra.mxu0 %v2370
  %3834 = vmatpush.bf16.msra.mxu0 %v2367
  %3835 = vmatpush.bf16.msra.mxu0 %v2364
  %3836 = vmatpush.bf16.msra.mxu0 %v2361
  %3837 = vmatpush.bf16.msra.mxu0 %v2358
  %3838 = vmatpush.bf16.msra.mxu0 %v2355
  %3839 = vmatpush.bf16.msra.mxu0 %v2352
  %3840 = vmatmul.bf16.gmra.mxu0 %v723
  %v3841 = vpop.f32.mrf.mxu0
  %v3842 = vadd.f32 %v3824, %v3841
  %v3843 = vpop.f32.mrf.mxu0
  %v3844 = vadd.f32 %v3826, %v3843
  %3845 = vmatmul.bf16.gmra.mxu0 %v741
  %v3846 = vpop.f32.mrf.mxu0
  %v3847 = vadd.f32 %v3829, %v3846
  %v3848 = vpop.f32.mrf.mxu0
  %3849 = vdwg.mxu0
  %3850 = vmatpush.bf16.msra.mxu0 %v2397
  %3851 = vmatpush.bf16.msra.mxu0 %v2394
  %3852 = vmatpush.bf16.msra.mxu0 %v2391
  %3853 = vmatpush.bf16.msra.mxu0 %v2388
  %3854 = vmatpush.bf16.msra.mxu0 %v2385
  %3855 = vmatpush.bf16.msra.mxu0 %v2382
  %3856 = vmatpush.bf16.msra.mxu0 %v2379
  %3857 = vmatpush.bf16.msra.mxu0 %v2376
  %3858 = vmatmul.bf16.gmra.mxu0 %v724
  %v3859 = vpop.f32.mrf.mxu0
  %v3860 = vadd.f32 %v3842, %v3859
  %v3861 = vpop.f32.mrf.mxu0
  %v3862 = vadd.f32 %v3844, %v3861
  %3863 = vmatmul.bf16.gmra.mxu0 %v742
  %v3864 = vpop.f32.mrf.mxu0
  %v3865 = vadd.f32 %v3847, %v3864
  %v3866 = vpop.f32.mrf.mxu0
  %3867 = vdwg.mxu0
  %3868 = vmatpush.bf16.msra.mxu0 %v2421
  %3869 = vmatpush.bf16.msra.mxu0 %v2418
  %3870 = vmatpush.bf16.msra.mxu0 %v2415
  %3871 = vmatpush.bf16.msra.mxu0 %v2412
  %3872 = vmatpush.bf16.msra.mxu0 %v2409
  %3873 = vmatpush.bf16.msra.mxu0 %v2406
  %3874 = vmatpush.bf16.msra.mxu0 %v2403
  %3875 = vmatpush.bf16.msra.mxu0 %v2400
  %3876 = vmatmul.bf16.gmra.mxu0 %v725
  %v3877 = vpop.f32.mrf.mxu0
  %v3878 = vadd.f32 %v3860, %v3877
  %v3879 = vpop.f32.mrf.mxu0
  %v3880 = vadd.f32 %v3862, %v3879
  %3881 = vmatmul.bf16.gmra.mxu0 %v743
  %v3882 = vpop.f32.mrf.mxu0
  %v3883 = vadd.f32 %v3865, %v3882
  %v3884 = vpop.f32.mrf.mxu0
  %3885 = vdwg.mxu0
  %3886 = vmatpush.bf16.msra.mxu0 %v2445
  %3887 = vmatpush.bf16.msra.mxu0 %v2442
  %3888 = vmatpush.bf16.msra.mxu0 %v2439
  %3889 = vmatpush.bf16.msra.mxu0 %v2436
  %3890 = vmatpush.bf16.msra.mxu0 %v2433
  %3891 = vmatpush.bf16.msra.mxu0 %v2430
  %3892 = vmatpush.bf16.msra.mxu0 %v2427
  %3893 = vmatpush.bf16.msra.mxu0 %v2424
  %3894 = vmatmul.bf16.gmra.mxu0 %v726
  %v3895 = vpop.f32.mrf.mxu0
  %v3896 = vadd.f32 %v3878, %v3895
  %v3897 = vpop.f32.mrf.mxu0
  %v3898 = vadd.f32 %v3880, %v3897
  %3899 = vmatmul.bf16.gmra.mxu0 %v744
  %v3900 = vpop.f32.mrf.mxu0
  %v3901 = vadd.f32 %v3883, %v3900
  %v3902 = vpop.f32.mrf.mxu0
  %3903 = vdwg.mxu0
  %3904 = vmatpush.bf16.msra.mxu0 %v2469
  %3905 = vmatpush.bf16.msra.mxu0 %v2466
  %3906 = vmatpush.bf16.msra.mxu0 %v2463
  %3907 = vmatpush.bf16.msra.mxu0 %v2460
  %3908 = vmatpush.bf16.msra.mxu0 %v2457
  %3909 = vmatpush.bf16.msra.mxu0 %v2454
  %3910 = vmatpush.bf16.msra.mxu0 %v2451
  %3911 = vmatpush.bf16.msra.mxu0 %v2448
  %3912 = vmatmul.bf16.gmra.mxu0 %v727
  %v3913 = vpop.f32.mrf.mxu0
  %v3914 = vadd.f32 %v3896, %v3913
  %v3915 = vpop.f32.mrf.mxu0
  %v3916 = vadd.f32 %v3898, %v3915
  %3917 = vmatmul.bf16.gmra.mxu0 %v745
  %v3918 = vpop.f32.mrf.mxu0
  %v3919 = vadd.f32 %v3901, %v3918
  %v3920 = vpop.f32.mrf.mxu0
  %3921 = vdwg.mxu0
  %3922 = vmatpush.bf16.msra.mxu0 %v2493
  %3923 = vmatpush.bf16.msra.mxu0 %v2490
  %3924 = vmatpush.bf16.msra.mxu0 %v2487
  %3925 = vmatpush.bf16.msra.mxu0 %v2484
  %3926 = vmatpush.bf16.msra.mxu0 %v2481
  %3927 = vmatpush.bf16.msra.mxu0 %v2478
  %3928 = vmatpush.bf16.msra.mxu0 %v2475
  %3929 = vmatpush.bf16.msra.mxu0 %v2472
  %3930 = vmatmul.bf16.gmra.mxu0 %v728
  %v3931 = vpop.f32.mrf.mxu0
  %v3932 = vadd.f32 %v3914, %v3931
  %v3933 = vpop.f32.mrf.mxu0
  %v3934 = vadd.f32 %v3916, %v3933
  %3935 = vmatmul.bf16.gmra.mxu0 %v746
  %v3936 = vpop.f32.mrf.mxu0
  %v3937 = vadd.f32 %v3919, %v3936
  %v3938 = vpop.f32.mrf.mxu0
  %3939 = vdwg.mxu0
  %3940 = vmatpush.bf16.msra.mxu0 %v2517
  %3941 = vmatpush.bf16.msra.mxu0 %v2514
  %3942 = vmatpush.bf16.msra.mxu0 %v2511
  %3943 = vmatpush.bf16.msra.mxu0 %v2508
  %3944 = vmatpush.bf16.msra.mxu0 %v2505
  %3945 = vmatpush.bf16.msra.mxu0 %v2502
  %3946 = vmatpush.bf16.msra.mxu0 %v2499
  %3947 = vmatpush.bf16.msra.mxu0 %v2496
  %3948 = vmatmul.bf16.gmra.mxu0 %v729
  %v3949 = vpop.f32.mrf.mxu0
  %v3950 = vadd.f32 %v3932, %v3949
  %v3951 = vpop.f32.mrf.mxu0
  %v3952 = vadd.f32 %v3934, %v3951
  %3953 = vmatmul.bf16.gmra.mxu0 %v747
  %v3954 = vpop.f32.mrf.mxu0
  %v3955 = vadd.f32 %v3937, %v3954
  %v3956 = vpop.f32.mrf.mxu0
  %3957 = vdwg.mxu0
  %3958 = vmatpush.bf16.msra.mxu0 %v2541
  %3959 = vmatpush.bf16.msra.mxu0 %v2538
  %3960 = vmatpush.bf16.msra.mxu0 %v2535
  %3961 = vmatpush.bf16.msra.mxu0 %v2532
  %3962 = vmatpush.bf16.msra.mxu0 %v2529
  %3963 = vmatpush.bf16.msra.mxu0 %v2526
  %3964 = vmatpush.bf16.msra.mxu0 %v2523
  %3965 = vmatpush.bf16.msra.mxu0 %v2520
  %3966 = vmatmul.bf16.gmra.mxu0 %v730
  %v3967 = vpop.f32.mrf.mxu0
  %v3968 = vadd.f32 %v3950, %v3967
  %v3969 = vpop.f32.mrf.mxu0
  %v3970 = vadd.f32 %v3952, %v3969
  %3971 = vmatmul.bf16.gmra.mxu0 %v748
  %v3972 = vpop.f32.mrf.mxu0
  %v3973 = vadd.f32 %v3955, %v3972
  %v3974 = vpop.f32.mrf.mxu0
  %3975 = vdwg.mxu0
  %3976 = vmatpush.bf16.msra.mxu0 %v2565
  %3977 = vmatpush.bf16.msra.mxu0 %v2562
  %3978 = vmatpush.bf16.msra.mxu0 %v2559
  %3979 = vmatpush.bf16.msra.mxu0 %v2556
  %3980 = vmatpush.bf16.msra.mxu0 %v2553
  %3981 = vmatpush.bf16.msra.mxu0 %v2550
  %3982 = vmatpush.bf16.msra.mxu0 %v2547
  %3983 = vmatpush.bf16.msra.mxu0 %v2544
  %3984 = vmatmul.bf16.gmra.mxu0 %v731
  %v3985 = vpop.f32.mrf.mxu0
  %v3986 = vadd.f32 %v3968, %v3985
  %v3987 = vpop.f32.mrf.mxu0
  %v3988 = vadd.f32 %v3970, %v3987
  %3989 = vmatmul.bf16.gmra.mxu0 %v749
  %v3990 = vpop.f32.mrf.mxu0
  %v3991 = vadd.f32 %v3973, %v3990
  %v3992 = vpop.f32.mrf.mxu0
  %3993 = vdwg.mxu0
  %3994 = vmatpush.bf16.msra.mxu0 %v2589
  %3995 = vmatpush.bf16.msra.mxu0 %v2586
  %3996 = vmatpush.bf16.msra.mxu0 %v2583
  %3997 = vmatpush.bf16.msra.mxu0 %v2580
  %3998 = vmatpush.bf16.msra.mxu0 %v2577
  %3999 = vmatpush.bf16.msra.mxu0 %v2574
  %4000 = vmatpush.bf16.msra.mxu0 %v2571
  %4001 = vmatpush.bf16.msra.mxu0 %v2568
  %4002 = vmatmul.bf16.gmra.mxu0 %v732
  %v4003 = vpop.f32.mrf.mxu0
  %v4004 = vadd.f32 %v3986, %v4003
  %v4005 = vpop.f32.mrf.mxu0
  %v4006 = vadd.f32 %v3988, %v4005
  %4007 = vmatmul.bf16.gmra.mxu0 %v750
  %v4008 = vpop.f32.mrf.mxu0
  %v4009 = vadd.f32 %v3991, %v4008
  %v4010 = vpop.f32.mrf.mxu0
  %4011 = vdwg.mxu0
  %4012 = vmatpush.bf16.msra.mxu0 %v2613
  %4013 = vmatpush.bf16.msra.mxu0 %v2610
  %4014 = vmatpush.bf16.msra.mxu0 %v2607
  %4015 = vmatpush.bf16.msra.mxu0 %v2604
  %4016 = vmatpush.bf16.msra.mxu0 %v2601
  %4017 = vmatpush.bf16.msra.mxu0 %v2598
  %4018 = vmatpush.bf16.msra.mxu0 %v2595
  %4019 = vmatpush.bf16.msra.mxu0 %v2592
  %4020 = vmatmul.bf16.gmra.mxu0 %v733
  %v4021 = vpop.f32.mrf.mxu0
  %v4022 = vadd.f32 %v4004, %v4021
  %v4023 = vpop.f32.mrf.mxu0
  %v4024 = vadd.f32 %v4006, %v4023
  %4025 = vmatmul.bf16.gmra.mxu0 %v751
  %v4026 = vpop.f32.mrf.mxu0
  %v4027 = vadd.f32 %v4009, %v4026
  %v4028 = vpop.f32.mrf.mxu0
  %4029 = vdwg.mxu0
  %4030 = vmatpush.bf16.msra.mxu0 %v2637
  %4031 = vmatpush.bf16.msra.mxu0 %v2634
  %4032 = vmatpush.bf16.msra.mxu0 %v2631
  %4033 = vmatpush.bf16.msra.mxu0 %v2628
  %4034 = vmatpush.bf16.msra.mxu0 %v2625
  %4035 = vmatpush.bf16.msra.mxu0 %v2622
  %4036 = vmatpush.bf16.msra.mxu0 %v2619
  %4037 = vmatpush.bf16.msra.mxu0 %v2616
  %4038 = vmatmul.bf16.gmra.mxu0 %v734
  %v4039 = vpop.f32.mrf.mxu0
  %v4040 = vadd.f32 %v4022, %v4039
  %v4041 = vpop.f32.mrf.mxu0
  %v4042 = vadd.f32 %v4024, %v4041
  %4043 = vmatmul.bf16.gmra.mxu0 %v752
  %v4044 = vpop.f32.mrf.mxu0
  %v4045 = vadd.f32 %v4027, %v4044
  %v4046 = vpop.f32.mrf.mxu0
  %4047 = vdwg.mxu0
  %4048 = vmatpush.bf16.msra.mxu0 %v2661
  %4049 = vmatpush.bf16.msra.mxu0 %v2658
  %4050 = vmatpush.bf16.msra.mxu0 %v2655
  %4051 = vmatpush.bf16.msra.mxu0 %v2652
  %4052 = vmatpush.bf16.msra.mxu0 %v2649
  %4053 = vmatpush.bf16.msra.mxu0 %v2646
  %4054 = vmatpush.bf16.msra.mxu0 %v2643
  %4055 = vmatpush.bf16.msra.mxu0 %v2640
  %4056 = vmatmul.bf16.gmra.mxu0 %v735
  %v4057 = vpop.f32.mrf.mxu0
  %v4058 = vadd.f32 %v4040, %v4057
  %v4059 = vpop.f32.mrf.mxu0
  %v4060 = vadd.f32 %v4042, %v4059
  %4061 = vmatmul.bf16.gmra.mxu0 %v753
  %v4062 = vpop.f32.mrf.mxu0
  %v4063 = vadd.f32 %v4045, %v4062
  %v4064 = vpop.f32.mrf.mxu0
  %4065 = vdwg.mxu0
  %v4066 = vmax.f32 %v3410, 0.0
  %v4067 = vmax.f32 %v3734, 0.0
  %v4068 = vmax.f32 %v4058, 0.0
  %v4069 = vmax.f32 %v3412, 0.0
  %v4070 = vmax.f32 %v3736, 0.0
  %v4071 = vmax.f32 %v4060, 0.0
  %v4072 = vmax.f32 %v3415, 0.0
  %v4073 = vmax.f32 %v3739, 0.0
  %v4074 = vmax.f32 %v4063, 0.0
  %v4075 = vpack.c.bf16 %v4069, %v4066
  %v4076 = vpack.c.bf16 %v4070, %v4067
  %v4077 = vpack.c.bf16 %v4071, %v4068
  %v4078 = vpack.c.bf16 %v4072, %v4072
  %v4079 = vpack.c.bf16 %v4073, %v4073
  %v4080 = vpack.c.bf16 %v4074, %v4074
  %v4081 = vld [vmem:[%s3] sm:$0xff]
  %v4082 = vld [vmem:[%s3 + $0x8] sm:$0xf]
  %v4083 = vld [vmem:[%s3 + $0xc] sm:$0xff]
  %v4084 = vld [vmem:[%s3 + $0x14] sm:$0xf]
  %v4085 = vld [vmem:[%s3 + $0x18] sm:$0xff]
  %v4086 = vld [vmem:[%s3 + $0x20] sm:$0xf]
  %v4087 = vld [vmem:[%s3 + $0x24] sm:$0xff]
  %v4088 = vld [vmem:[%s3 + $0x2c] sm:$0xf]
  %v4089 = vld [vmem:[%s3 + $0x30] sm:$0xff]
  %v4090 = vld [vmem:[%s3 + $0x38] sm:$0xf]
  %v4091 = vld [vmem:[%s3 + $0x3c] sm:$0xff]
  %v4092 = vld [vmem:[%s3 + $0x44] sm:$0xf]
  %v4093 = vld [vmem:[%s3 + $0x48] sm:$0xff]
  %v4094 = vld [vmem:[%s3 + $0x50] sm:$0xf]
  %v4095 = vld [vmem:[%s3 + $0x54] sm:$0xff]
  %v4096 = vld [vmem:[%s3 + $0x5c] sm:$0xf]
  %v4097 = vld [vmem:[%s3 + $0x60] sm:$0xff]
  %v4098 = vld [vmem:[%s3 + $0x68] sm:$0xf]
  %v4099 = vld [vmem:[%s3 + $0x6c] sm:$0xff]
  %v4100 = vld [vmem:[%s3 + $0x74] sm:$0xf]
  %v4101 = vld [vmem:[%s3 + $0x78] sm:$0xff]
  %v4102 = vld [vmem:[%s3 + $0x80] sm:$0xf]
  %v4103 = vld [vmem:[%s3 + $0x84] sm:$0xff]
  %v4104 = vld [vmem:[%s3 + $0x8c] sm:$0xf]
  %v4105 = vld [vmem:[%s3 + $0x90] sm:$0xff]
  %v4106 = vld [vmem:[%s3 + $0x98] sm:$0xf]
  %v4107 = vld [vmem:[%s3 + $0x9c] sm:$0xff]
  %v4108 = vld [vmem:[%s3 + $0xa4] sm:$0xf]
  %v4109 = vld [vmem:[%s3 + $0xa8] sm:$0xff]
  %v4110 = vld [vmem:[%s3 + $0xb0] sm:$0xf]
  %v4111 = vld [vmem:[%s3 + $0xb4] sm:$0xff]
  %v4112 = vld [vmem:[%s3 + $0xbc] sm:$0xf]
  %v4113 = vld [vmem:[%s3 + $0xc0] sm:$0xff]
  %v4114 = vld [vmem:[%s3 + $0xc8] sm:$0xf]
  %v4115 = vld [vmem:[%s3 + $0xcc] sm:$0xff]
  %v4116 = vld [vmem:[%s3 + $0xd4] sm:$0xf]
  %v4117 = vld [vmem:[%s3 + $0xd8] sm:$0xff]
  %v4118 = vld [vmem:[%s3 + $0xe0] sm:$0xf]
  %v4119 = vld [vmem:[%s3 + $0xe4] sm:$0xff]
  %v4120 = vld [vmem:[%s3 + $0xec] sm:$0xf]
  %v4121 = vld [vmem:[%s3 + $0xf0] sm:$0xff]
  %v4122 = vld [vmem:[%s3 + $0xf8] sm:$0xf]
  %v4123 = vld [vmem:[%s3 + $0xfc] sm:$0xff]
  %v4124 = vld [vmem:[%s3 + $0x104] sm:$0xf]
  %v4125 = vld [vmem:[%s3 + $0x108] sm:$0xff]
  %v4126 = vld [vmem:[%s3 + $0x110] sm:$0xf]
  %v4127 = vld [vmem:[%s3 + $0x114] sm:$0xff]
  %v4128 = vld [vmem:[%s3 + $0x11c] sm:$0xf]
  %v4129 = vld [vmem:[%s3 + $0x120] sm:$0xff]
  %v4130 = vld [vmem:[%s3 + $0x128] sm:$0xf]
  %v4131 = vld [vmem:[%s3 + $0x12c] sm:$0xff]
  %v4132 = vld [vmem:[%s3 + $0x134] sm:$0xf]
  %v4133 = vld [vmem:[%s3 + $0x138] sm:$0xff]
  %v4134 = vld [vmem:[%s3 + $0x140] sm:$0xf]
  %v4135 = vld [vmem:[%s3 + $0x144] sm:$0xff]
  %v4136 = vld [vmem:[%s3 + $0x14c] sm:$0xf]
  %v4137 = vld [vmem:[%s3 + $0x150] sm:$0xff]
  %v4138 = vld [vmem:[%s3 + $0x158] sm:$0xf]
  %v4139 = vld [vmem:[%s3 + $0x15c] sm:$0xff]
  %v4140 = vld [vmem:[%s3 + $0x164] sm:$0xf]
  %v4141 = vld [vmem:[%s3 + $0x168] sm:$0xff]
  %v4142 = vld [vmem:[%s3 + $0x170] sm:$0xf]
  %v4143 = vld [vmem:[%s3 + $0x174] sm:$0xff]
  %v4144 = vld [vmem:[%s3 + $0x17c] sm:$0xf]
  %v4145 = vld [vmem:[%s3 + $0x180] sm:$0xff]
  %v4146 = vld [vmem:[%s3 + $0x188] sm:$0xf]
  %v4147 = vld [vmem:[%s3 + $0x18c] sm:$0xff]
  %v4148 = vld [vmem:[%s3 + $0x194] sm:$0xf]
  %v4149 = vld [vmem:[%s3 + $0x198] sm:$0xff]
  %v4150 = vld [vmem:[%s3 + $0x1a0] sm:$0xf]
  %v4151 = vld [vmem:[%s3 + $0x1a4] sm:$0xff]
  %v4152 = vld [vmem:[%s3 + $0x1ac] sm:$0xf]
  %v4153 = vld [vmem:[%s3 + $0x1b0] sm:$0xff]
  %v4154 = vld [vmem:[%s3 + $0x1b8] sm:$0xf]
  %v4155 = vld [vmem:[%s3 + $0x1bc] sm:$0xff]
  %v4156 = vld [vmem:[%s3 + $0x1c4] sm:$0xf]
  %v4157 = vld [vmem:[%s3 + $0x1c8] sm:$0xff]
  %v4158 = vld [vmem:[%s3 + $0x1d0] sm:$0xf]
  %v4159 = vld [vmem:[%s3 + $0x1d4] sm:$0xff]
  %v4160 = vld [vmem:[%s3 + $0x1dc] sm:$0xf]
  %v4161 = vld [vmem:[%s3 + $0x1e0] sm:$0xff]
  %v4162 = vld [vmem:[%s3 + $0x1e8] sm:$0xf]
  %v4163 = vld [vmem:[%s3 + $0x1ec] sm:$0xff]
  %v4164 = vld [vmem:[%s3 + $0x1f4] sm:$0xf]
  %v4165 = vld [vmem:[%s3 + $0x1f8] sm:$0xff]
  %v4166 = vld [vmem:[%s3 + $0x200] sm:$0xf]
  %v4167 = vld [vmem:[%s3 + $0x204] sm:$0xff]
  %v4168 = vld [vmem:[%s3 + $0x20c] sm:$0xf]
  %v4169 = vld [vmem:[%s3 + $0x210] sm:$0xff]
  %v4170 = vld [vmem:[%s3 + $0x218] sm:$0xf]
  %v4171 = vld [vmem:[%s3 + $0x21c] sm:$0xff]
  %v4172 = vld [vmem:[%s3 + $0x224] sm:$0xf]
  %v4173 = vld [vmem:[%s3 + $0x228] sm:$0xff]
  %v4174 = vld [vmem:[%s3 + $0x230] sm:$0xf]
  %v4175 = vld [vmem:[%s3 + $0x234] sm:$0xff]
  %v4176 = vld [vmem:[%s3 + $0x23c] sm:$0xf]
  %v4177 = vld [vmem:[%s4] sm:$0x7]
  %v4179 = vperm.slane %v4177, 0
  %v4180 = vperm.slane %v4177, 1
  %v4181 = vperm.slane %v4177, 2
  %v4281 = vunpack.c.l.b16 %v4081
  %v4282 = vunpack.c.h.b16 %v4081
  %v4283 = vunpack.c.l.b16 %v4082
  %v4284 = vunpack.c.l.b16 %v4083
  %v4285 = vunpack.c.h.b16 %v4083
  %v4286 = vunpack.c.l.b16 %v4084
  %v4287 = vunpack.c.l.b16 %v4085
  %v4288 = vunpack.c.h.b16 %v4085
  %v4289 = vunpack.c.l.b16 %v4086
  %v4290 = vunpack.c.l.b16 %v4087
  %v4291 = vunpack.c.h.b16 %v4087
  %v4292 = vunpack.c.l.b16 %v4088
  %v4293 = vunpack.c.l.b16 %v4089
  %v4294 = vunpack.c.h.b16 %v4089
  %v4295 = vunpack.c.l.b16 %v4090
  %v4296 = vunpack.c.l.b16 %v4091
  %v4297 = vunpack.c.h.b16 %v4091
  %v4298 = vunpack.c.l.b16 %v4092
  %v4299 = vunpack.c.l.b16 %v4093
  %v4300 = vunpack.c.h.b16 %v4093
  %v4301 = vunpack.c.l.b16 %v4094
  %v4302 = vunpack.c.l.b16 %v4095
  %v4303 = vunpack.c.h.b16 %v4095
  %v4304 = vunpack.c.l.b16 %v4096
  %v4305 = vunpack.c.l.b16 %v4097
  %v4306 = vunpack.c.h.b16 %v4097
  %v4307 = vunpack.c.l.b16 %v4098
  %v4308 = vunpack.c.l.b16 %v4099
  %v4309 = vunpack.c.h.b16 %v4099
  %v4310 = vunpack.c.l.b16 %v4100
  %v4311 = vunpack.c.l.b16 %v4101
  %v4312 = vunpack.c.h.b16 %v4101
  %v4313 = vunpack.c.l.b16 %v4102
  %v4314 = vunpack.c.l.b16 %v4103
  %v4315 = vunpack.c.h.b16 %v4103
  %v4316 = vunpack.c.l.b16 %v4104
  %v4317 = vunpack.c.l.b16 %v4105
  %v4318 = vunpack.c.h.b16 %v4105
  %v4319 = vunpack.c.l.b16 %v4106
  %v4320 = vunpack.c.l.b16 %v4107
  %v4321 = vunpack.c.h.b16 %v4107
  %v4322 = vunpack.c.l.b16 %v4108
  %v4323 = vunpack.c.l.b16 %v4109
  %v4324 = vunpack.c.h.b16 %v4109
  %v4325 = vunpack.c.l.b16 %v4110
  %v4326 = vunpack.c.l.b16 %v4111
  %v4327 = vunpack.c.h.b16 %v4111
  %v4328 = vunpack.c.l.b16 %v4112
  %v4329 = vunpack.c.l.b16 %v4113
  %v4330 = vunpack.c.h.b16 %v4113
  %v4331 = vunpack.c.l.b16 %v4114
  %v4332 = vunpack.c.l.b16 %v4115
  %v4333 = vunpack.c.h.b16 %v4115
  %v4334 = vunpack.c.l.b16 %v4116
  %v4335 = vunpack.c.l.b16 %v4117
  %v4336 = vunpack.c.h.b16 %v4117
  %v4337 = vunpack.c.l.b16 %v4118
  %v4338 = vunpack.c.l.b16 %v4119
  %v4339 = vunpack.c.h.b16 %v4119
  %v4340 = vunpack.c.l.b16 %v4120
  %v4341 = vunpack.c.l.b16 %v4121
  %v4342 = vunpack.c.h.b16 %v4121
  %v4343 = vunpack.c.l.b16 %v4122
  %v4344 = vunpack.c.l.b16 %v4123
  %v4345 = vunpack.c.h.b16 %v4123
  %v4346 = vunpack.c.l.b16 %v4124
  %v4347 = vunpack.c.l.b16 %v4125
  %v4348 = vunpack.c.h.b16 %v4125
  %v4349 = vunpack.c.l.b16 %v4126
  %v4350 = vunpack.c.l.b16 %v4127
  %v4351 = vunpack.c.h.b16 %v4127
  %v4352 = vunpack.c.l.b16 %v4128
  %v4353 = vunpack.c.l.b16 %v4129
  %v4354 = vunpack.c.h.b16 %v4129
  %v4355 = vunpack.c.l.b16 %v4130
  %v4356 = vunpack.c.l.b16 %v4131
  %v4357 = vunpack.c.h.b16 %v4131
  %v4358 = vunpack.c.l.b16 %v4132
  %v4359 = vunpack.c.l.b16 %v4133
  %v4360 = vunpack.c.h.b16 %v4133
  %v4361 = vunpack.c.l.b16 %v4134
  %v4362 = vunpack.c.l.b16 %v4135
  %v4363 = vunpack.c.h.b16 %v4135
  %v4364 = vunpack.c.l.b16 %v4136
  %v4365 = vunpack.c.l.b16 %v4137
  %v4366 = vunpack.c.h.b16 %v4137
  %v4367 = vunpack.c.l.b16 %v4138
  %v4368 = vunpack.c.l.b16 %v4139
  %v4369 = vunpack.c.h.b16 %v4139
  %v4370 = vunpack.c.l.b16 %v4140
  %v4371 = vunpack.c.l.b16 %v4141
  %v4372 = vunpack.c.h.b16 %v4141
  %v4373 = vunpack.c.l.b16 %v4142
  %v4374 = vunpack.c.l.b16 %v4143
  %v4375 = vunpack.c.h.b16 %v4143
  %v4376 = vunpack.c.l.b16 %v4144
  %v4377 = vunpack.c.l.b16 %v4145
  %v4378 = vunpack.c.h.b16 %v4145
  %v4379 = vunpack.c.l.b16 %v4146
  %v4380 = vunpack.c.l.b16 %v4147
  %v4381 = vunpack.c.h.b16 %v4147
  %v4382 = vunpack.c.l.b16 %v4148
  %v4383 = vunpack.c.l.b16 %v4149
  %v4384 = vunpack.c.h.b16 %v4149
  %v4385 = vunpack.c.l.b16 %v4150
  %v4386 = vunpack.c.l.b16 %v4151
  %v4387 = vunpack.c.h.b16 %v4151
  %v4388 = vunpack.c.l.b16 %v4152
  %v4389 = vunpack.c.l.b16 %v4153
  %v4390 = vunpack.c.h.b16 %v4153
  %v4391 = vunpack.c.l.b16 %v4154
  %v4392 = vunpack.c.l.b16 %v4155
  %v4393 = vunpack.c.h.b16 %v4155
  %v4394 = vunpack.c.l.b16 %v4156
  %v4395 = vunpack.c.l.b16 %v4157
  %v4396 = vunpack.c.h.b16 %v4157
  %v4397 = vunpack.c.l.b16 %v4158
  %v4398 = vunpack.c.l.b16 %v4159
  %v4399 = vunpack.c.h.b16 %v4159
  %v4400 = vunpack.c.l.b16 %v4160
  %v4401 = vunpack.c.l.b16 %v4161
  %v4402 = vunpack.c.h.b16 %v4161
  %v4403 = vunpack.c.l.b16 %v4162
  %v4404 = vunpack.c.l.b16 %v4163
  %v4405 = vunpack.c.h.b16 %v4163
  %v4406 = vunpack.c.l.b16 %v4164
  %v4407 = vunpack.c.l.b16 %v4165
  %v4408 = vunpack.c.h.b16 %v4165
  %v4409 = vunpack.c.l.b16 %v4166
  %v4410 = vunpack.c.l.b16 %v4167
  %v4411 = vunpack.c.h.b16 %v4167
  %v4412 = vunpack.c.l.b16 %v4168
  %v4413 = vunpack.c.l.b16 %v4169
  %v4414 = vunpack.c.h.b16 %v4169
  %v4415 = vunpack.c.l.b16 %v4170
  %v4416 = vunpack.c.l.b16 %v4171
  %v4417 = vunpack.c.h.b16 %v4171
  %v4418 = vunpack.c.l.b16 %v4172
  %v4419 = vunpack.c.l.b16 %v4173
  %v4420 = vunpack.c.h.b16 %v4173
  %v4421 = vunpack.c.l.b16 %v4174
  %v4422 = vunpack.c.l.b16 %v4175
  %v4423 = vunpack.c.h.b16 %v4175
  %v4424 = vunpack.c.l.b16 %v4176
  %v4425 = vpack.c.b16 %v4284, %v4281
  %v4426 = vpack.c.b16 %v4285, %v4282
  %v4427 = vpack.c.b16 %v4286, %v4283
  %v4428 = vpack.c.b16 %v4290, %v4287
  %v4429 = vpack.c.b16 %v4291, %v4288
  %v4430 = vpack.c.b16 %v4292, %v4289
  %v4431 = vpack.c.b16 %v4296, %v4293
  %v4432 = vpack.c.b16 %v4297, %v4294
  %v4433 = vpack.c.b16 %v4298, %v4295
  %v4434 = vpack.c.b16 %v4302, %v4299
  %v4435 = vpack.c.b16 %v4303, %v4300
  %v4436 = vpack.c.b16 %v4304, %v4301
  %v4437 = vpack.c.b16 %v4308, %v4305
  %v4438 = vpack.c.b16 %v4309, %v4306
  %v4439 = vpack.c.b16 %v4310, %v4307
  %v4440 = vpack.c.b16 %v4314, %v4311
  %v4441 = vpack.c.b16 %v4315, %v4312
  %v4442 = vpack.c.b16 %v4316, %v4313
  %v4443 = vpack.c.b16 %v4320, %v4317
  %v4444 = vpack.c.b16 %v4321, %v4318
  %v4445 = vpack.c.b16 %v4322, %v4319
  %v4446 = vpack.c.b16 %v4326, %v4323
  %v4447 = vpack.c.b16 %v4327, %v4324
  %v4448 = vpack.c.b16 %v4328, %v4325
  %v4449 = vpack.c.b16 %v4332, %v4329
  %v4450 = vpack.c.b16 %v4333, %v4330
  %v4451 = vpack.c.b16 %v4334, %v4331
  %v4452 = vpack.c.b16 %v4338, %v4335
  %v4453 = vpack.c.b16 %v4339, %v4336
  %v4454 = vpack.c.b16 %v4340, %v4337
  %v4455 = vpack.c.b16 %v4344, %v4341
  %v4456 = vpack.c.b16 %v4345, %v4342
  %v4457 = vpack.c.b16 %v4346, %v4343
  %v4458 = vpack.c.b16 %v4350, %v4347
  %v4459 = vpack.c.b16 %v4351, %v4348
  %v4460 = vpack.c.b16 %v4352, %v4349
  %v4461 = vpack.c.b16 %v4356, %v4353
  %v4462 = vpack.c.b16 %v4357, %v4354
  %v4463 = vpack.c.b16 %v4358, %v4355
  %v4464 = vpack.c.b16 %v4362, %v4359
  %v4465 = vpack.c.b16 %v4363, %v4360
  %v4466 = vpack.c.b16 %v4364, %v4361
  %v4467 = vpack.c.b16 %v4368, %v4365
  %v4468 = vpack.c.b16 %v4369, %v4366
  %v4469 = vpack.c.b16 %v4370, %v4367
  %v4470 = vpack.c.b16 %v4374, %v4371
  %v4471 = vpack.c.b16 %v4375, %v4372
  %v4472 = vpack.c.b16 %v4376, %v4373
  %v4473 = vpack.c.b16 %v4380, %v4377
  %v4474 = vpack.c.b16 %v4381, %v4378
  %v4475 = vpack.c.b16 %v4382, %v4379
  %v4476 = vpack.c.b16 %v4386, %v4383
  %v4477 = vpack.c.b16 %v4387, %v4384
  %v4478 = vpack.c.b16 %v4388, %v4385
  %v4479 = vpack.c.b16 %v4392, %v4389
  %v4480 = vpack.c.b16 %v4393, %v4390
  %v4481 = vpack.c.b16 %v4394, %v4391
  %v4482 = vpack.c.b16 %v4398, %v4395
  %v4483 = vpack.c.b16 %v4399, %v4396
  %v4484 = vpack.c.b16 %v4400, %v4397
  %v4485 = vpack.c.b16 %v4404, %v4401
  %v4486 = vpack.c.b16 %v4405, %v4402
  %v4487 = vpack.c.b16 %v4406, %v4403
  %v4488 = vpack.c.b16 %v4410, %v4407
  %v4489 = vpack.c.b16 %v4411, %v4408
  %v4490 = vpack.c.b16 %v4412, %v4409
  %v4491 = vpack.c.b16 %v4416, %v4413
  %v4492 = vpack.c.b16 %v4417, %v4414
  %v4493 = vpack.c.b16 %v4418, %v4415
  %v4494 = vpack.c.b16 %v4422, %v4419
  %v4495 = vpack.c.b16 %v4423, %v4420
  %v4496 = vpack.c.b16 %v4424, %v4421
  %4569 = vmatpush.bf16.msra.mxu0 %v4446
  %4570 = vmatpush.bf16.msra.mxu0 %v4443
  %4571 = vmatpush.bf16.msra.mxu0 %v4440
  %4572 = vmatpush.bf16.msra.mxu0 %v4437
  %4573 = vmatpush.bf16.msra.mxu0 %v4434
  %4574 = vmatpush.bf16.msra.mxu0 %v4431
  %4575 = vmatpush.bf16.msra.mxu0 %v4428
  %4576 = vmatpush.bf16.msra.mxu0 %v4425
  %4577 = vmatmul.bf16.gmra.mxu0 %v4075
  %v4578 = vpop.f32.mrf.mxu0
  %v4579 = vadd.f32 %v4179, %v4578
  %v4580 = vpop.f32.mrf.mxu0
  %v4581 = vadd.f32 %v4179, %v4580
  %4582 = vmatmul.bf16.gmra.mxu0 %v4078
  %v4583 = vpop.f32.mrf.mxu0
  %v4584 = vadd.f32 %v4179, %v4583
  %v4585 = vpop.f32.mrf.mxu0
  %4586 = vdwg.mxu0
  %4587 = vmatpush.bf16.msra.mxu0 %v4470
  %4588 = vmatpush.bf16.msra.mxu0 %v4467
  %4589 = vmatpush.bf16.msra.mxu0 %v4464
  %4590 = vmatpush.bf16.msra.mxu0 %v4461
  %4591 = vmatpush.bf16.msra.mxu0 %v4458
  %4592 = vmatpush.bf16.msra.mxu0 %v4455
  %4593 = vmatpush.bf16.msra.mxu0 %v4452
  %4594 = vmatpush.bf16.msra.mxu0 %v4449
  %4595 = vmatmul.bf16.gmra.mxu0 %v4076
  %v4596 = vpop.f32.mrf.mxu0
  %v4597 = vadd.f32 %v4579, %v4596
  %v4598 = vpop.f32.mrf.mxu0
  %v4599 = vadd.f32 %v4581, %v4598
  %4600 = vmatmul.bf16.gmra.mxu0 %v4079
  %v4601 = vpop.f32.mrf.mxu0
  %v4602 = vadd.f32 %v4584, %v4601
  %v4603 = vpop.f32.mrf.mxu0
  %4604 = vdwg.mxu0
  %4605 = vmatpush.bf16.msra.mxu0 %v4494
  %4606 = vmatpush.bf16.msra.mxu0 %v4491
  %4607 = vmatpush.bf16.msra.mxu0 %v4488
  %4608 = vmatpush.bf16.msra.mxu0 %v4485
  %4609 = vmatpush.bf16.msra.mxu0 %v4482
  %4610 = vmatpush.bf16.msra.mxu0 %v4479
  %4611 = vmatpush.bf16.msra.mxu0 %v4476
  %4612 = vmatpush.bf16.msra.mxu0 %v4473
  %4613 = vmatmul.bf16.gmra.mxu0 %v4077
  %v4614 = vpop.f32.mrf.mxu0
  %v4615 = vadd.f32 %v4597, %v4614
  %v4616 = vpop.f32.mrf.mxu0
  %v4617 = vadd.f32 %v4599, %v4616
  %4618 = vmatmul.bf16.gmra.mxu0 %v4080
  %v4619 = vpop.f32.mrf.mxu0
  %v4620 = vadd.f32 %v4602, %v4619
  %v4621 = vpop.f32.mrf.mxu0
  %4622 = vdwg.mxu0
  %4623 = vmatpush.bf16.msra.mxu0 %v4447
  %4624 = vmatpush.bf16.msra.mxu0 %v4444
  %4625 = vmatpush.bf16.msra.mxu0 %v4441
  %4626 = vmatpush.bf16.msra.mxu0 %v4438
  %4627 = vmatpush.bf16.msra.mxu0 %v4435
  %4628 = vmatpush.bf16.msra.mxu0 %v4432
  %4629 = vmatpush.bf16.msra.mxu0 %v4429
  %4630 = vmatpush.bf16.msra.mxu0 %v4426
  %4631 = vmatmul.bf16.gmra.mxu0 %v4075
  %v4632 = vpop.f32.mrf.mxu0
  %v4633 = vadd.f32 %v4180, %v4632
  %v4634 = vpop.f32.mrf.mxu0
  %v4635 = vadd.f32 %v4180, %v4634
  %4636 = vmatmul.bf16.gmra.mxu0 %v4078
  %v4637 = vpop.f32.mrf.mxu0
  %v4638 = vadd.f32 %v4180, %v4637
  %v4639 = vpop.f32.mrf.mxu0
  %4640 = vdwg.mxu0
  %4641 = vmatpush.bf16.msra.mxu0 %v4471
  %4642 = vmatpush.bf16.msra.mxu0 %v4468
  %4643 = vmatpush.bf16.msra.mxu0 %v4465
  %4644 = vmatpush.bf16.msra.mxu0 %v4462
  %4645 = vmatpush.bf16.msra.mxu0 %v4459
  %4646 = vmatpush.bf16.msra.mxu0 %v4456
  %4647 = vmatpush.bf16.msra.mxu0 %v4453
  %4648 = vmatpush.bf16.msra.mxu0 %v4450
  %4649 = vmatmul.bf16.gmra.mxu0 %v4076
  %v4650 = vpop.f32.mrf.mxu0
  %v4651 = vadd.f32 %v4633, %v4650
  %v4652 = vpop.f32.mrf.mxu0
  %v4653 = vadd.f32 %v4635, %v4652
  %4654 = vmatmul.bf16.gmra.mxu0 %v4079
  %v4655 = vpop.f32.mrf.mxu0
  %v4656 = vadd.f32 %v4638, %v4655
  %v4657 = vpop.f32.mrf.mxu0
  %4658 = vdwg.mxu0
  %4659 = vmatpush.bf16.msra.mxu0 %v4495
  %4660 = vmatpush.bf16.msra.mxu0 %v4492
  %4661 = vmatpush.bf16.msra.mxu0 %v4489
  %4662 = vmatpush.bf16.msra.mxu0 %v4486
  %4663 = vmatpush.bf16.msra.mxu0 %v4483
  %4664 = vmatpush.bf16.msra.mxu0 %v4480
  %4665 = vmatpush.bf16.msra.mxu0 %v4477
  %4666 = vmatpush.bf16.msra.mxu0 %v4474
  %4667 = vmatmul.bf16.gmra.mxu0 %v4077
  %v4668 = vpop.f32.mrf.mxu0
  %v4669 = vadd.f32 %v4651, %v4668
  %v4670 = vpop.f32.mrf.mxu0
  %v4671 = vadd.f32 %v4653, %v4670
  %4672 = vmatmul.bf16.gmra.mxu0 %v4080
  %v4673 = vpop.f32.mrf.mxu0
  %v4674 = vadd.f32 %v4656, %v4673
  %v4675 = vpop.f32.mrf.mxu0
  %4676 = vdwg.mxu0
  %4677 = vmatpush.bf16.msra.mxu0 %v4448
  %4678 = vmatpush.bf16.msra.mxu0 %v4445
  %4679 = vmatpush.bf16.msra.mxu0 %v4442
  %4680 = vmatpush.bf16.msra.mxu0 %v4439
  %4681 = vmatpush.bf16.msra.mxu0 %v4436
  %4682 = vmatpush.bf16.msra.mxu0 %v4433
  %4683 = vmatpush.bf16.msra.mxu0 %v4430
  %4684 = vmatpush.bf16.msra.mxu0 %v4427
  %4685 = vmatmul.bf16.gmra.mxu0 %v4075
  %v4686 = vpop.f32.mrf.mxu0
  %v4687 = vadd.f32 %v4181, %v4686
  %v4688 = vpop.f32.mrf.mxu0
  %v4689 = vadd.f32 %v4181, %v4688
  %4690 = vmatmul.bf16.gmra.mxu0 %v4078
  %v4691 = vpop.f32.mrf.mxu0
  %v4692 = vadd.f32 %v4181, %v4691
  %v4693 = vpop.f32.mrf.mxu0
  %4694 = vdwg.mxu0
  %4695 = vmatpush.bf16.msra.mxu0 %v4472
  %4696 = vmatpush.bf16.msra.mxu0 %v4469
  %4697 = vmatpush.bf16.msra.mxu0 %v4466
  %4698 = vmatpush.bf16.msra.mxu0 %v4463
  %4699 = vmatpush.bf16.msra.mxu0 %v4460
  %4700 = vmatpush.bf16.msra.mxu0 %v4457
  %4701 = vmatpush.bf16.msra.mxu0 %v4454
  %4702 = vmatpush.bf16.msra.mxu0 %v4451
  %4703 = vmatmul.bf16.gmra.mxu0 %v4076
  %v4704 = vpop.f32.mrf.mxu0
  %v4705 = vadd.f32 %v4687, %v4704
  %v4706 = vpop.f32.mrf.mxu0
  %v4707 = vadd.f32 %v4689, %v4706
  %4708 = vmatmul.bf16.gmra.mxu0 %v4079
  %v4709 = vpop.f32.mrf.mxu0
  %v4710 = vadd.f32 %v4692, %v4709
  %v4711 = vpop.f32.mrf.mxu0
  %4712 = vdwg.mxu0
  %4713 = vmatpush.bf16.msra.mxu0 %v4496
  %4714 = vmatpush.bf16.msra.mxu0 %v4493
  %4715 = vmatpush.bf16.msra.mxu0 %v4490
  %4716 = vmatpush.bf16.msra.mxu0 %v4487
  %4717 = vmatpush.bf16.msra.mxu0 %v4484
  %4718 = vmatpush.bf16.msra.mxu0 %v4481
  %4719 = vmatpush.bf16.msra.mxu0 %v4478
  %4720 = vmatpush.bf16.msra.mxu0 %v4475
  %4721 = vmatmul.bf16.gmra.mxu0 %v4077
  %v4722 = vpop.f32.mrf.mxu0
  %v4723 = vadd.f32 %v4705, %v4722
  %v4724 = vpop.f32.mrf.mxu0
  %v4725 = vadd.f32 %v4707, %v4724
  %4726 = vmatmul.bf16.gmra.mxu0 %v4080
  %v4727 = vpop.f32.mrf.mxu0
  %v4728 = vadd.f32 %v4710, %v4727
  %v4729 = vpop.f32.mrf.mxu0
  %4730 = vdwg.mxu0
  %v4731 = vmax.f32 %v4615, 0.0
  %v4732 = vmax.f32 %v4669, 0.0
  %v4733 = vmax.f32 %v4723, 0.0
  %v4734 = vmax.f32 %v4617, 0.0
  %v4735 = vmax.f32 %v4671, 0.0
  %v4736 = vmax.f32 %v4725, 0.0
  %v4737 = vmax.f32 %v4620, 0.0
  %v4738 = vmax.f32 %v4674, 0.0
  %v4739 = vmax.f32 %v4728, 0.0
  %v4740 = vpack.c.bf16 %v4734, %v4731
  %v4741 = vpack.c.bf16 %v4735, %v4732
  %v4742 = vpack.c.bf16 %v4736, %v4733
  %v4743 = vpack.c.bf16 %v4737, %v4737
  %v4744 = vpack.c.bf16 %v4738, %v4738
  %v4745 = vpack.c.bf16 %v4739, %v4739
  %v4746 = vld [vmem:[%s5] sm:$0xff]
  %v4747 = vld [vmem:[%s5 + $0x8] sm:$0xf]
  %v4748 = vld [vmem:[%s5 + $0xc] sm:$0xff]
  %v4749 = vld [vmem:[%s5 + $0x14] sm:$0xf]
  %v4750 = vld [vmem:[%s5 + $0x18] sm:$0xff]
  %v4751 = vld [vmem:[%s5 + $0x20] sm:$0xf]
  %v4752 = vld [vmem:[%s5 + $0x24] sm:$0xff]
  %v4753 = vld [vmem:[%s5 + $0x2c] sm:$0xf]
  %v4754 = vld [vmem:[%s5 + $0x30] sm:$0xff]
  %v4755 = vld [vmem:[%s5 + $0x38] sm:$0xf]
  %v4756 = vld [vmem:[%s5 + $0x3c] sm:$0xff]
  %v4757 = vld [vmem:[%s5 + $0x44] sm:$0xf]
  %v4758 = vld [vmem:[%s5 + $0x48] sm:$0xff]
  %v4759 = vld [vmem:[%s5 + $0x50] sm:$0xf]
  %v4760 = vld [vmem:[%s5 + $0x54] sm:$0xff]
  %v4761 = vld [vmem:[%s5 + $0x5c] sm:$0xf]
  %v4762 = vld [vmem:[%s5 + $0x60] sm:$0xff]
  %v4763 = vld [vmem:[%s5 + $0x68] sm:$0xf]
  %v4764 = vld [vmem:[%s5 + $0x6c] sm:$0xff]
  %v4765 = vld [vmem:[%s5 + $0x74] sm:$0xf]
  %v4766 = vld [vmem:[%s5 + $0x78] sm:$0xff]
  %v4767 = vld [vmem:[%s5 + $0x80] sm:$0xf]
  %v4768 = vld [vmem:[%s5 + $0x84] sm:$0xff]
  %v4769 = vld [vmem:[%s5 + $0x8c] sm:$0xf]
  %v4770 = vld [vmem:[%s5 + $0x90] sm:$0xff]
  %v4771 = vld [vmem:[%s5 + $0x98] sm:$0xf]
  %v4772 = vld [vmem:[%s5 + $0x9c] sm:$0xff]
  %v4773 = vld [vmem:[%s5 + $0xa4] sm:$0xf]
  %v4774 = vld [vmem:[%s5 + $0xa8] sm:$0xff]
  %v4775 = vld [vmem:[%s5 + $0xb0] sm:$0xf]
  %v4776 = vld [vmem:[%s5 + $0xb4] sm:$0xff]
  %v4777 = vld [vmem:[%s5 + $0xbc] sm:$0xf]
  %v4778 = vld [vmem:[%s5 + $0xc0] sm:$0xff]
  %v4779 = vld [vmem:[%s5 + $0xc8] sm:$0xf]
  %v4780 = vld [vmem:[%s5 + $0xcc] sm:$0xff]
  %v4781 = vld [vmem:[%s5 + $0xd4] sm:$0xf]
  %v4782 = vld [vmem:[%s5 + $0xd8] sm:$0xff]
  %v4783 = vld [vmem:[%s5 + $0xe0] sm:$0xf]
  %v4784 = vld [vmem:[%s5 + $0xe4] sm:$0xff]
  %v4785 = vld [vmem:[%s5 + $0xec] sm:$0xf]
  %v4786 = vld [vmem:[%s5 + $0xf0] sm:$0xff]
  %v4787 = vld [vmem:[%s5 + $0xf8] sm:$0xf]
  %v4788 = vld [vmem:[%s5 + $0xfc] sm:$0xff]
  %v4789 = vld [vmem:[%s5 + $0x104] sm:$0xf]
  %v4790 = vld [vmem:[%s5 + $0x108] sm:$0xff]
  %v4791 = vld [vmem:[%s5 + $0x110] sm:$0xf]
  %v4792 = vld [vmem:[%s5 + $0x114] sm:$0xff]
  %v4793 = vld [vmem:[%s5 + $0x11c] sm:$0xf]
  %v4794 = vld [vmem:[%s5 + $0x120] sm:$0xff]
  %v4795 = vld [vmem:[%s5 + $0x128] sm:$0xf]
  %v4796 = vld [vmem:[%s5 + $0x12c] sm:$0xff]
  %v4797 = vld [vmem:[%s5 + $0x134] sm:$0xf]
  %v4798 = vld [vmem:[%s5 + $0x138] sm:$0xff]
  %v4799 = vld [vmem:[%s5 + $0x140] sm:$0xf]
  %v4800 = vld [vmem:[%s5 + $0x144] sm:$0xff]
  %v4801 = vld [vmem:[%s5 + $0x14c] sm:$0xf]
  %v4802 = vld [vmem:[%s5 + $0x150] sm:$0xff]
  %v4803 = vld [vmem:[%s5 + $0x158] sm:$0xf]
  %v4804 = vld [vmem:[%s5 + $0x15c] sm:$0xff]
  %v4805 = vld [vmem:[%s5 + $0x164] sm:$0xf]
  %v4806 = vld [vmem:[%s5 + $0x168] sm:$0xff]
  %v4807 = vld [vmem:[%s5 + $0x170] sm:$0xf]
  %v4808 = vld [vmem:[%s5 + $0x174] sm:$0xff]
  %v4809 = vld [vmem:[%s5 + $0x17c] sm:$0xf]
  %v4810 = vld [vmem:[%s5 + $0x180] sm:$0xff]
  %v4811 = vld [vmem:[%s5 + $0x188] sm:$0xf]
  %v4812 = vld [vmem:[%s5 + $0x18c] sm:$0xff]
  %v4813 = vld [vmem:[%s5 + $0x194] sm:$0xf]
  %v4814 = vld [vmem:[%s5 + $0x198] sm:$0xff]
  %v4815 = vld [vmem:[%s5 + $0x1a0] sm:$0xf]
  %v4816 = vld [vmem:[%s5 + $0x1a4] sm:$0xff]
  %v4817 = vld [vmem:[%s5 + $0x1ac] sm:$0xf]
  %v4818 = vld [vmem:[%s5 + $0x1b0] sm:$0xff]
  %v4819 = vld [vmem:[%s5 + $0x1b8] sm:$0xf]
  %v4820 = vld [vmem:[%s5 + $0x1bc] sm:$0xff]
  %v4821 = vld [vmem:[%s5 + $0x1c4] sm:$0xf]
  %v4822 = vld [vmem:[%s5 + $0x1c8] sm:$0xff]
  %v4823 = vld [vmem:[%s5 + $0x1d0] sm:$0xf]
  %v4824 = vld [vmem:[%s5 + $0x1d4] sm:$0xff]
  %v4825 = vld [vmem:[%s5 + $0x1dc] sm:$0xf]
  %v4826 = vld [vmem:[%s5 + $0x1e0] sm:$0xff]
  %v4827 = vld [vmem:[%s5 + $0x1e8] sm:$0xf]
  %v4828 = vld [vmem:[%s5 + $0x1ec] sm:$0xff]
  %v4829 = vld [vmem:[%s5 + $0x1f4] sm:$0xf]
  %v4830 = vld [vmem:[%s5 + $0x1f8] sm:$0xff]
  %v4831 = vld [vmem:[%s5 + $0x200] sm:$0xf]
  %v4832 = vld [vmem:[%s5 + $0x204] sm:$0xff]
  %v4833 = vld [vmem:[%s5 + $0x20c] sm:$0xf]
  %v4834 = vld [vmem:[%s5 + $0x210] sm:$0xff]
  %v4835 = vld [vmem:[%s5 + $0x218] sm:$0xf]
  %v4836 = vld [vmem:[%s5 + $0x21c] sm:$0xff]
  %v4837 = vld [vmem:[%s5 + $0x224] sm:$0xf]
  %v4838 = vld [vmem:[%s5 + $0x228] sm:$0xff]
  %v4839 = vld [vmem:[%s5 + $0x230] sm:$0xf]
  %v4840 = vld [vmem:[%s5 + $0x234] sm:$0xff]
  %v4841 = vld [vmem:[%s5 + $0x23c] sm:$0xf]
  %v4842 = vld [vmem:[%s6] sm:$0x7]
  %v4844 = vperm.slane %v4842, 0
  %v4845 = vperm.slane %v4842, 1
  %v4846 = vperm.slane %v4842, 2
  %v4946 = vunpack.c.l.b16 %v4746
  %v4947 = vunpack.c.h.b16 %v4746
  %v4948 = vunpack.c.l.b16 %v4747
  %v4949 = vunpack.c.l.b16 %v4748
  %v4950 = vunpack.c.h.b16 %v4748
  %v4951 = vunpack.c.l.b16 %v4749
  %v4952 = vunpack.c.l.b16 %v4750
  %v4953 = vunpack.c.h.b16 %v4750
  %v4954 = vunpack.c.l.b16 %v4751
  %v4955 = vunpack.c.l.b16 %v4752
  %v4956 = vunpack.c.h.b16 %v4752
  %v4957 = vunpack.c.l.b16 %v4753
  %v4958 = vunpack.c.l.b16 %v4754
  %v4959 = vunpack.c.h.b16 %v4754
  %v4960 = vunpack.c.l.b16 %v4755
  %v4961 = vunpack.c.l.b16 %v4756
  %v4962 = vunpack.c.h.b16 %v4756
  %v4963 = vunpack.c.l.b16 %v4757
  %v4964 = vunpack.c.l.b16 %v4758
  %v4965 = vunpack.c.h.b16 %v4758
  %v4966 = vunpack.c.l.b16 %v4759
  %v4967 = vunpack.c.l.b16 %v4760
  %v4968 = vunpack.c.h.b16 %v4760
  %v4969 = vunpack.c.l.b16 %v4761
  %v4970 = vunpack.c.l.b16 %v4762
  %v4971 = vunpack.c.h.b16 %v4762
  %v4972 = vunpack.c.l.b16 %v4763
  %v4973 = vunpack.c.l.b16 %v4764
  %v4974 = vunpack.c.h.b16 %v4764
  %v4975 = vunpack.c.l.b16 %v4765
  %v4976 = vunpack.c.l.b16 %v4766
  %v4977 = vunpack.c.h.b16 %v4766
  %v4978 = vunpack.c.l.b16 %v4767
  %v4979 = vunpack.c.l.b16 %v4768
  %v4980 = vunpack.c.h.b16 %v4768
  %v4981 = vunpack.c.l.b16 %v4769
  %v4982 = vunpack.c.l.b16 %v4770
  %v4983 = vunpack.c.h.b16 %v4770
  %v4984 = vunpack.c.l.b16 %v4771
  %v4985 = vunpack.c.l.b16 %v4772
  %v4986 = vunpack.c.h.b16 %v4772
  %v4987 = vunpack.c.l.b16 %v4773
  %v4988 = vunpack.c.l.b16 %v4774
  %v4989 = vunpack.c.h.b16 %v4774
  %v4990 = vunpack.c.l.b16 %v4775
  %v4991 = vunpack.c.l.b16 %v4776
  %v4992 = vunpack.c.h.b16 %v4776
  %v4993 = vunpack.c.l.b16 %v4777
  %v4994 = vunpack.c.l.b16 %v4778
  %v4995 = vunpack.c.h.b16 %v4778
  %v4996 = vunpack.c.l.b16 %v4779
  %v4997 = vunpack.c.l.b16 %v4780
  %v4998 = vunpack.c.h.b16 %v4780
  %v4999 = vunpack.c.l.b16 %v4781
  %v5000 = vunpack.c.l.b16 %v4782
  %v5001 = vunpack.c.h.b16 %v4782
  %v5002 = vunpack.c.l.b16 %v4783
  %v5003 = vunpack.c.l.b16 %v4784
  %v5004 = vunpack.c.h.b16 %v4784
  %v5005 = vunpack.c.l.b16 %v4785
  %v5006 = vunpack.c.l.b16 %v4786
  %v5007 = vunpack.c.h.b16 %v4786
  %v5008 = vunpack.c.l.b16 %v4787
  %v5009 = vunpack.c.l.b16 %v4788
  %v5010 = vunpack.c.h.b16 %v4788
  %v5011 = vunpack.c.l.b16 %v4789
  %v5012 = vunpack.c.l.b16 %v4790
  %v5013 = vunpack.c.h.b16 %v4790
  %v5014 = vunpack.c.l.b16 %v4791
  %v5015 = vunpack.c.l.b16 %v4792
  %v5016 = vunpack.c.h.b16 %v4792
  %v5017 = vunpack.c.l.b16 %v4793
  %v5018 = vunpack.c.l.b16 %v4794
  %v5019 = vunpack.c.h.b16 %v4794
  %v5020 = vunpack.c.l.b16 %v4795
  %v5021 = vunpack.c.l.b16 %v4796
  %v5022 = vunpack.c.h.b16 %v4796
  %v5023 = vunpack.c.l.b16 %v4797
  %v5024 = vunpack.c.l.b16 %v4798
  %v5025 = vunpack.c.h.b16 %v4798
  %v5026 = vunpack.c.l.b16 %v4799
  %v5027 = vunpack.c.l.b16 %v4800
  %v5028 = vunpack.c.h.b16 %v4800
  %v5029 = vunpack.c.l.b16 %v4801
  %v5030 = vunpack.c.l.b16 %v4802
  %v5031 = vunpack.c.h.b16 %v4802
  %v5032 = vunpack.c.l.b16 %v4803
  %v5033 = vunpack.c.l.b16 %v4804
  %v5034 = vunpack.c.h.b16 %v4804
  %v5035 = vunpack.c.l.b16 %v4805
  %v5036 = vunpack.c.l.b16 %v4806
  %v5037 = vunpack.c.h.b16 %v4806
  %v5038 = vunpack.c.l.b16 %v4807
  %v5039 = vunpack.c.l.b16 %v4808
  %v5040 = vunpack.c.h.b16 %v4808
  %v5041 = vunpack.c.l.b16 %v4809
  %v5042 = vunpack.c.l.b16 %v4810
  %v5043 = vunpack.c.h.b16 %v4810
  %v5044 = vunpack.c.l.b16 %v4811
  %v5045 = vunpack.c.l.b16 %v4812
  %v5046 = vunpack.c.h.b16 %v4812
  %v5047 = vunpack.c.l.b16 %v4813
  %v5048 = vunpack.c.l.b16 %v4814
  %v5049 = vunpack.c.h.b16 %v4814
  %v5050 = vunpack.c.l.b16 %v4815
  %v5051 = vunpack.c.l.b16 %v4816
  %v5052 = vunpack.c.h.b16 %v4816
  %v5053 = vunpack.c.l.b16 %v4817
  %v5054 = vunpack.c.l.b16 %v4818
  %v5055 = vunpack.c.h.b16 %v4818
  %v5056 = vunpack.c.l.b16 %v4819
  %v5057 = vunpack.c.l.b16 %v4820
  %v5058 = vunpack.c.h.b16 %v4820
  %v5059 = vunpack.c.l.b16 %v4821
  %v5060 = vunpack.c.l.b16 %v4822
  %v5061 = vunpack.c.h.b16 %v4822
  %v5062 = vunpack.c.l.b16 %v4823
  %v5063 = vunpack.c.l.b16 %v4824
  %v5064 = vunpack.c.h.b16 %v4824
  %v5065 = vunpack.c.l.b16 %v4825
  %v5066 = vunpack.c.l.b16 %v4826
  %v5067 = vunpack.c.h.b16 %v4826
  %v5068 = vunpack.c.l.b16 %v4827
  %v5069 = vunpack.c.l.b16 %v4828
  %v5070 = vunpack.c.h.b16 %v4828
  %v5071 = vunpack.c.l.b16 %v4829
  %v5072 = vunpack.c.l.b16 %v4830
  %v5073 = vunpack.c.h.b16 %v4830
  %v5074 = vunpack.c.l.b16 %v4831
  %v5075 = vunpack.c.l.b16 %v4832
  %v5076 = vunpack.c.h.b16 %v4832
  %v5077 = vunpack.c.l.b16 %v4833
  %v5078 = vunpack.c.l.b16 %v4834
  %v5079 = vunpack.c.h.b16 %v4834
  %v5080 = vunpack.c.l.b16 %v4835
  %v5081 = vunpack.c.l.b16 %v4836
  %v5082 = vunpack.c.h.b16 %v4836
  %v5083 = vunpack.c.l.b16 %v4837
  %v5084 = vunpack.c.l.b16 %v4838
  %v5085 = vunpack.c.h.b16 %v4838
  %v5086 = vunpack.c.l.b16 %v4839
  %v5087 = vunpack.c.l.b16 %v4840
  %v5088 = vunpack.c.h.b16 %v4840
  %v5089 = vunpack.c.l.b16 %v4841
  %v5090 = vpack.c.b16 %v4949, %v4946
  %v5091 = vpack.c.b16 %v4950, %v4947
  %v5092 = vpack.c.b16 %v4951, %v4948
  %v5093 = vpack.c.b16 %v4955, %v4952
  %v5094 = vpack.c.b16 %v4956, %v4953
  %v5095 = vpack.c.b16 %v4957, %v4954
  %v5096 = vpack.c.b16 %v4961, %v4958
  %v5097 = vpack.c.b16 %v4962, %v4959
  %v5098 = vpack.c.b16 %v4963, %v4960
  %v5099 = vpack.c.b16 %v4967, %v4964
  %v5100 = vpack.c.b16 %v4968, %v4965
  %v5101 = vpack.c.b16 %v4969, %v4966
  %v5102 = vpack.c.b16 %v4973, %v4970
  %v5103 = vpack.c.b16 %v4974, %v4971
  %v5104 = vpack.c.b16 %v4975, %v4972
  %v5105 = vpack.c.b16 %v4979, %v4976
  %v5106 = vpack.c.b16 %v4980, %v4977
  %v5107 = vpack.c.b16 %v4981, %v4978
  %v5108 = vpack.c.b16 %v4985, %v4982
  %v5109 = vpack.c.b16 %v4986, %v4983
  %v5110 = vpack.c.b16 %v4987, %v4984
  %v5111 = vpack.c.b16 %v4991, %v4988
  %v5112 = vpack.c.b16 %v4992, %v4989
  %v5113 = vpack.c.b16 %v4993, %v4990
  %v5114 = vpack.c.b16 %v4997, %v4994
  %v5115 = vpack.c.b16 %v4998, %v4995
  %v5116 = vpack.c.b16 %v4999, %v4996
  %v5117 = vpack.c.b16 %v5003, %v5000
  %v5118 = vpack.c.b16 %v5004, %v5001
  %v5119 = vpack.c.b16 %v5005, %v5002
  %v5120 = vpack.c.b16 %v5009, %v5006
  %v5121 = vpack.c.b16 %v5010, %v5007
  %v5122 = vpack.c.b16 %v5011, %v5008
  %v5123 = vpack.c.b16 %v5015, %v5012
  %v5124 = vpack.c.b16 %v5016, %v5013
  %v5125 = vpack.c.b16 %v5017, %v5014
  %v5126 = vpack.c.b16 %v5021, %v5018
  %v5127 = vpack.c.b16 %v5022, %v5019
  %v5128 = vpack.c.b16 %v5023, %v5020
  %v5129 = vpack.c.b16 %v5027, %v5024
  %v5130 = vpack.c.b16 %v5028, %v5025
  %v5131 = vpack.c.b16 %v5029, %v5026
  %v5132 = vpack.c.b16 %v5033, %v5030
  %v5133 = vpack.c.b16 %v5034, %v5031
  %v5134 = vpack.c.b16 %v5035, %v5032
  %v5135 = vpack.c.b16 %v5039, %v5036
  %v5136 = vpack.c.b16 %v5040, %v5037
  %v5137 = vpack.c.b16 %v5041, %v5038
  %v5138 = vpack.c.b16 %v5045, %v5042
  %v5139 = vpack.c.b16 %v5046, %v5043
  %v5140 = vpack.c.b16 %v5047, %v5044
  %v5141 = vpack.c.b16 %v5051, %v5048
  %v5142 = vpack.c.b16 %v5052, %v5049
  %v5143 = vpack.c.b16 %v5053, %v5050
  %v5144 = vpack.c.b16 %v5057, %v5054
  %v5145 = vpack.c.b16 %v5058, %v5055
  %v5146 = vpack.c.b16 %v5059, %v5056
  %v5147 = vpack.c.b16 %v5063, %v5060
  %v5148 = vpack.c.b16 %v5064, %v5061
  %v5149 = vpack.c.b16 %v5065, %v5062
  %v5150 = vpack.c.b16 %v5069, %v5066
  %v5151 = vpack.c.b16 %v5070, %v5067
  %v5152 = vpack.c.b16 %v5071, %v5068
  %v5153 = vpack.c.b16 %v5075, %v5072
  %v5154 = vpack.c.b16 %v5076, %v5073
  %v5155 = vpack.c.b16 %v5077, %v5074
  %v5156 = vpack.c.b16 %v5081, %v5078
  %v5157 = vpack.c.b16 %v5082, %v5079
  %v5158 = vpack.c.b16 %v5083, %v5080
  %v5159 = vpack.c.b16 %v5087, %v5084
  %v5160 = vpack.c.b16 %v5088, %v5085
  %v5161 = vpack.c.b16 %v5089, %v5086
  %5234 = vmatpush.bf16.msra.mxu0 %v5111
  %5235 = vmatpush.bf16.msra.mxu0 %v5108
  %5236 = vmatpush.bf16.msra.mxu0 %v5105
  %5237 = vmatpush.bf16.msra.mxu0 %v5102
  %5238 = vmatpush.bf16.msra.mxu0 %v5099
  %5239 = vmatpush.bf16.msra.mxu0 %v5096
  %5240 = vmatpush.bf16.msra.mxu0 %v5093
  %5241 = vmatpush.bf16.msra.mxu0 %v5090
  %5242 = vmatmul.bf16.gmra.mxu0 %v4740
  %v5243 = vpop.f32.mrf.mxu0
  %v5244 = vadd.f32 %v4844, %v5243
  %v5245 = vpop.f32.mrf.mxu0
  %v5246 = vadd.f32 %v4844, %v5245
  %5247 = vmatmul.bf16.gmra.mxu0 %v4743
  %v5248 = vpop.f32.mrf.mxu0
  %v5249 = vadd.f32 %v4844, %v5248
  %v5250 = vpop.f32.mrf.mxu0
  %5251 = vdwg.mxu0
  %5252 = vmatpush.bf16.msra.mxu0 %v5135
  %5253 = vmatpush.bf16.msra.mxu0 %v5132
  %5254 = vmatpush.bf16.msra.mxu0 %v5129
  %5255 = vmatpush.bf16.msra.mxu0 %v5126
  %5256 = vmatpush.bf16.msra.mxu0 %v5123
  %5257 = vmatpush.bf16.msra.mxu0 %v5120
  %5258 = vmatpush.bf16.msra.mxu0 %v5117
  %5259 = vmatpush.bf16.msra.mxu0 %v5114
  %5260 = vmatmul.bf16.gmra.mxu0 %v4741
  %v5261 = vpop.f32.mrf.mxu0
  %v5262 = vadd.f32 %v5244, %v5261
  %v5263 = vpop.f32.mrf.mxu0
  %v5264 = vadd.f32 %v5246, %v5263
  %5265 = vmatmul.bf16.gmra.mxu0 %v4744
  %v5266 = vpop.f32.mrf.mxu0
  %v5267 = vadd.f32 %v5249, %v5266
  %v5268 = vpop.f32.mrf.mxu0
  %5269 = vdwg.mxu0
  %5270 = vmatpush.bf16.msra.mxu0 %v5159
  %5271 = vmatpush.bf16.msra.mxu0 %v5156
  %5272 = vmatpush.bf16.msra.mxu0 %v5153
  %5273 = vmatpush.bf16.msra.mxu0 %v5150
  %5274 = vmatpush.bf16.msra.mxu0 %v5147
  %5275 = vmatpush.bf16.msra.mxu0 %v5144
  %5276 = vmatpush.bf16.msra.mxu0 %v5141
  %5277 = vmatpush.bf16.msra.mxu0 %v5138
  %5278 = vmatmul.bf16.gmra.mxu0 %v4742
  %v5279 = vpop.f32.mrf.mxu0
  %v5280 = vadd.f32 %v5262, %v5279
  %v5281 = vpop.f32.mrf.mxu0
  %v5282 = vadd.f32 %v5264, %v5281
  %5283 = vmatmul.bf16.gmra.mxu0 %v4745
  %v5284 = vpop.f32.mrf.mxu0
  %v5285 = vadd.f32 %v5267, %v5284
  %v5286 = vpop.f32.mrf.mxu0
  %5287 = vdwg.mxu0
  %5288 = vmatpush.bf16.msra.mxu0 %v5112
  %5289 = vmatpush.bf16.msra.mxu0 %v5109
  %5290 = vmatpush.bf16.msra.mxu0 %v5106
  %5291 = vmatpush.bf16.msra.mxu0 %v5103
  %5292 = vmatpush.bf16.msra.mxu0 %v5100
  %5293 = vmatpush.bf16.msra.mxu0 %v5097
  %5294 = vmatpush.bf16.msra.mxu0 %v5094
  %5295 = vmatpush.bf16.msra.mxu0 %v5091
  %5296 = vmatmul.bf16.gmra.mxu0 %v4740
  %v5297 = vpop.f32.mrf.mxu0
  %v5298 = vadd.f32 %v4845, %v5297
  %v5299 = vpop.f32.mrf.mxu0
  %v5300 = vadd.f32 %v4845, %v5299
  %5301 = vmatmul.bf16.gmra.mxu0 %v4743
  %v5302 = vpop.f32.mrf.mxu0
  %v5303 = vadd.f32 %v4845, %v5302
  %v5304 = vpop.f32.mrf.mxu0
  %5305 = vdwg.mxu0
  %5306 = vmatpush.bf16.msra.mxu0 %v5136
  %5307 = vmatpush.bf16.msra.mxu0 %v5133
  %5308 = vmatpush.bf16.msra.mxu0 %v5130
  %5309 = vmatpush.bf16.msra.mxu0 %v5127
  %5310 = vmatpush.bf16.msra.mxu0 %v5124
  %5311 = vmatpush.bf16.msra.mxu0 %v5121
  %5312 = vmatpush.bf16.msra.mxu0 %v5118
  %5313 = vmatpush.bf16.msra.mxu0 %v5115
  %5314 = vmatmul.bf16.gmra.mxu0 %v4741
  %v5315 = vpop.f32.mrf.mxu0
  %v5316 = vadd.f32 %v5298, %v5315
  %v5317 = vpop.f32.mrf.mxu0
  %v5318 = vadd.f32 %v5300, %v5317
  %5319 = vmatmul.bf16.gmra.mxu0 %v4744
  %v5320 = vpop.f32.mrf.mxu0
  %v5321 = vadd.f32 %v5303, %v5320
  %v5322 = vpop.f32.mrf.mxu0
  %5323 = vdwg.mxu0
  %5324 = vmatpush.bf16.msra.mxu0 %v5160
  %5325 = vmatpush.bf16.msra.mxu0 %v5157
  %5326 = vmatpush.bf16.msra.mxu0 %v5154
  %5327 = vmatpush.bf16.msra.mxu0 %v5151
  %5328 = vmatpush.bf16.msra.mxu0 %v5148
  %5329 = vmatpush.bf16.msra.mxu0 %v5145
  %5330 = vmatpush.bf16.msra.mxu0 %v5142
  %5331 = vmatpush.bf16.msra.mxu0 %v5139
  %5332 = vmatmul.bf16.gmra.mxu0 %v4742
  %v5333 = vpop.f32.mrf.mxu0
  %v5334 = vadd.f32 %v5316, %v5333
  %v5335 = vpop.f32.mrf.mxu0
  %v5336 = vadd.f32 %v5318, %v5335
  %5337 = vmatmul.bf16.gmra.mxu0 %v4745
  %v5338 = vpop.f32.mrf.mxu0
  %v5339 = vadd.f32 %v5321, %v5338
  %v5340 = vpop.f32.mrf.mxu0
  %5341 = vdwg.mxu0
  %5342 = vmatpush.bf16.msra.mxu0 %v5113
  %5343 = vmatpush.bf16.msra.mxu0 %v5110
  %5344 = vmatpush.bf16.msra.mxu0 %v5107
  %5345 = vmatpush.bf16.msra.mxu0 %v5104
  %5346 = vmatpush.bf16.msra.mxu0 %v5101
  %5347 = vmatpush.bf16.msra.mxu0 %v5098
  %5348 = vmatpush.bf16.msra.mxu0 %v5095
  %5349 = vmatpush.bf16.msra.mxu0 %v5092
  %5350 = vmatmul.bf16.gmra.mxu0 %v4740
  %v5351 = vpop.f32.mrf.mxu0
  %v5352 = vadd.f32 %v4846, %v5351
  %v5353 = vpop.f32.mrf.mxu0
  %v5354 = vadd.f32 %v4846, %v5353
  %5355 = vmatmul.bf16.gmra.mxu0 %v4743
  %v5356 = vpop.f32.mrf.mxu0
  %v5357 = vadd.f32 %v4846, %v5356
  %v5358 = vpop.f32.mrf.mxu0
  %5359 = vdwg.mxu0
  %5360 = vmatpush.bf16.msra.mxu0 %v5137
  %5361 = vmatpush.bf16.msra.mxu0 %v5134
  %5362 = vmatpush.bf16.msra.mxu0 %v5131
  %5363 = vmatpush.bf16.msra.mxu0 %v5128
  %5364 = vmatpush.bf16.msra.mxu0 %v5125
  %5365 = vmatpush.bf16.msra.mxu0 %v5122
  %5366 = vmatpush.bf16.msra.mxu0 %v5119
  %5367 = vmatpush.bf16.msra.mxu0 %v5116
  %5368 = vmatmul.bf16.gmra.mxu0 %v4741
  %v5369 = vpop.f32.mrf.mxu0
  %v5370 = vadd.f32 %v5352, %v5369
  %v5371 = vpop.f32.mrf.mxu0
  %v5372 = vadd.f32 %v5354, %v5371
  %5373 = vmatmul.bf16.gmra.mxu0 %v4744
  %v5374 = vpop.f32.mrf.mxu0
  %v5375 = vadd.f32 %v5357, %v5374
  %v5376 = vpop.f32.mrf.mxu0
  %5377 = vdwg.mxu0
  %5378 = vmatpush.bf16.msra.mxu0 %v5161
  %5379 = vmatpush.bf16.msra.mxu0 %v5158
  %5380 = vmatpush.bf16.msra.mxu0 %v5155
  %5381 = vmatpush.bf16.msra.mxu0 %v5152
  %5382 = vmatpush.bf16.msra.mxu0 %v5149
  %5383 = vmatpush.bf16.msra.mxu0 %v5146
  %5384 = vmatpush.bf16.msra.mxu0 %v5143
  %5385 = vmatpush.bf16.msra.mxu0 %v5140
  %5386 = vmatmul.bf16.gmra.mxu0 %v4742
  %v5387 = vpop.f32.mrf.mxu0
  %v5388 = vadd.f32 %v5370, %v5387
  %v5389 = vpop.f32.mrf.mxu0
  %v5390 = vadd.f32 %v5372, %v5389
  %5391 = vmatmul.bf16.gmra.mxu0 %v4745
  %v5392 = vpop.f32.mrf.mxu0
  %v5393 = vadd.f32 %v5375, %v5392
  %v5394 = vpop.f32.mrf.mxu0
  %5395 = vdwg.mxu0
  %v5396 = vmax.f32 %v5280, 0.0
  %v5397 = vmax.f32 %v5334, 0.0
  %v5398 = vmax.f32 %v5388, 0.0
  %v5399 = vmax.f32 %v5282, 0.0
  %v5400 = vmax.f32 %v5336, 0.0
  %v5401 = vmax.f32 %v5390, 0.0
  %v5402 = vmax.f32 %v5285, 0.0
  %v5403 = vmax.f32 %v5339, 0.0
  %v5404 = vmax.f32 %v5393, 0.0
  %v5405 = vpack.c.bf16 %v5397, %v5396
  %v5406 = vpack.c.bf16 %v5398, %v5398
  %v5407 = vpack.c.bf16 %v5400, %v5399
  %v5408 = vpack.c.bf16 %v5401, %v5401
  %v5409 = vpack.c.bf16 %v5403, %v5402
  %v5410 = vpack.c.bf16 %v5404, %v5404
  %5411 = vst [vmem:[%s7] sm:$0xff] %v5405
  %5412 = vst [vmem:[%s7 + $0x8] sm:$0xf] %v5406
  %5413 = vst [vmem:[%s7 + $0xc] sm:$0xff] %v5407
  %5414 = vst [vmem:[%s7 + $0x14] sm:$0xf] %v5408
  %5415 = vst [vmem:[%s7 + $0x18] sm:$0xff] %v5409
  %5416 = vst [vmem:[%s7 + $0x20] sm:$0xf] %v5410
  // Predicated region
  $region30: #{net_forward.6} parent=0 // pred_check
    _
  $region31: #{net_forward.6} parent=0 // pred_check_branch
    %5418 = sbr.rel (0) target = $region33
  $region32: #{net_forward.6} parent=0 // pred_region
    _
  $region33: #{net_forward.6} parent=0 // pred_fallthru
    _
  // Predicated region
  $region34: #{net_forward.6} parent=0 // pred_check
    _
  $region35: #{net_forward.6} parent=0 // pred_check_branch
    %5420 = sbr.rel (0) target = $region37
  $region36: #{net_forward.6} parent=0 // pred_region
    _
  $region37: #{net_forward.6} parent=0 // pred_fallthru
    _

</llo_original>
